<compile_context>
chip_gen: v5e
topology: v5e:2x2
jax: 0.10.0
libtpu: 0.0.40
codegen_flags: <defaults>
</compile_context>

<pallas_src>
import jax
import jax.numpy as jnp
from jax.experimental import pallas as pl
from jax.experimental.pallas import tpu as pltpu

SUB = 8            # batch rows per grid block = one f32 sublane tile
NUM_CLASSES = 10
CPAD = 128         # lane-padded channel / feature width


# ------------------------------ fused kernel -------------------------------

def lenet_fused_kernel(patch_ref, y_ref, w1_ref, b1_ref, w2_ref, b2_ref,
                       w3_ref, b3_ref, w4_ref, b4_ref, w5_ref, b5_ref,
                       out_ref):
    f32 = jnp.float32

    # ---- conv1 (im2col matmul) + bias + relu -------------------------------
    # patch rows ordered (oh, ow, b_local); lanes = kernel taps (25 of 32).
    h1 = jnp.dot(patch_ref[...], w1_ref[...], preferred_element_type=f32)
    h1 = jnp.maximum(h1 + b1_ref[...], 0.0)            # (24*24*SUB, 128)
    h1 = h1.reshape(24, 24, SUB, CPAD)                  # (oh, ow, b, c)

    # ---- pool1: 2x2 max over leading (spatial) dims only -------------------
    r1 = h1.reshape(12, 2, 12, 2, SUB, CPAD)
    p1 = jnp.maximum(jnp.maximum(r1[:, 0, :, 0], r1[:, 0, :, 1]),
                     jnp.maximum(r1[:, 1, :, 0], r1[:, 1, :, 1]))
    # p1: (12, 12, SUB, 128)

    # ---- conv2 as 25 shifted matmuls (channels stay in lanes) --------------
    acc2 = jnp.zeros((8 * 8 * SUB, CPAD), f32)
    for kh in range(5):
        for kw in range(5):
            lhs = p1[kh:kh + 8, kw:kw + 8].reshape(8 * 8 * SUB, CPAD)
            acc2 = acc2 + jnp.dot(lhs, w2_ref[kh * 5 + kw],
                                  preferred_element_type=f32)
    h2 = jnp.maximum(acc2 + b2_ref[...], 0.0)
    h2 = h2.reshape(8, 8, SUB, CPAD)                     # (oh, ow, b, c)

    # ---- pool2 --------------------------------------------------------------
    r2 = h2.reshape(4, 2, 4, 2, SUB, CPAD)
    p2 = jnp.maximum(jnp.maximum(r2[:, 0, :, 0], r2[:, 0, :, 1]),
                     jnp.maximum(r2[:, 1, :, 0], r2[:, 1, :, 1]))
    # p2: (4, 4, SUB, 128)

    # ---- fc1: sum over 16 spatial positions (no flatten/transpose needed) --
    acc3 = jnp.zeros((SUB, CPAD), f32)
    for h in range(4):
        for w in range(4):
            acc3 = acc3 + jnp.dot(p2[h, w], w3_ref[h * 4 + w],
                                  preferred_element_type=f32)
    f1 = jnp.maximum(acc3 + b3_ref[...], 0.0)            # (SUB, 128)

    # ---- fc2 / fc3 ----------------------------------------------------------
    f2 = jnp.maximum(jnp.dot(f1, w4_ref[...], preferred_element_type=f32)
                     + b4_ref[...], 0.0)
    logits = jnp.dot(f2, w5_ref[...], preferred_element_type=f32) + b5_ref[...]

    # ---- cross-entropy (sum), one-hot built in-kernel ----------------------
    lane = jax.lax.broadcasted_iota(jnp.int32, (SUB, CPAD), 1)
    class_mask = lane < NUM_CLASSES
    masked = jnp.where(class_mask, logits, -1e30)
    m = jnp.max(masked, axis=-1, keepdims=True)
    s = jnp.sum(jnp.exp(masked - m), axis=-1, keepdims=True)
    lse = m + jnp.log(s)
    yv = y_ref[...]                                       # (SUB, 1) int32, -1 = pad row
    tgt = jnp.sum(jnp.where(lane == yv, logits, 0.0), axis=-1, keepdims=True)
    per_row = jnp.where(yv >= 0, lse - tgt, 0.0)          # (SUB, 1)

    # lane-dense store of per-sample losses (invalid rows are 0)
    out_ref[...] = jnp.broadcast_to(per_row, (SUB, CPAD))


# --------------------------- one-time weight pack ---------------------------

def prepare_params(params):
    """Pad / permute weights once, outside the per-step hot path."""
    f32 = jnp.float32
    w1 = params["w1"].reshape(6, 25).T                                  # (25, 6)
    w1p = jnp.zeros((32, CPAD), f32).at[:25, :6].set(w1)
    b1p = jnp.zeros((1, CPAD), f32).at[0, :6].set(params["b1"])

    w2 = params["w2"].transpose(2, 3, 1, 0).reshape(25, 6, 16)          # (kh*5+kw, ic, oc)
    w2p = jnp.zeros((25, CPAD, CPAD), f32).at[:, :6, :16].set(w2)
    b2p = jnp.zeros((1, CPAD), f32).at[0, :16].set(params["b2"])

    # fc1 expects PyTorch NCHW-flatten order (c*16 + h*4 + w); re-pack per (h,w).
    w3 = params["w3"].reshape(120, 16, 4, 4).transpose(2, 3, 1, 0)      # (h, w, c, oc)
    w3 = w3.reshape(16, 16, 120)                                        # (h*4+w, c, oc)
    w3p = jnp.zeros((16, CPAD, CPAD), f32).at[:, :16, :120].set(w3)
    b3p = jnp.zeros((1, CPAD), f32).at[0, :120].set(params["b3"])

    w4p = jnp.zeros((CPAD, CPAD), f32).at[:120, :84].set(params["w4"].T)
    b4p = jnp.zeros((1, CPAD), f32).at[0, :84].set(params["b4"])
    w5p = jnp.zeros((CPAD, CPAD), f32).at[:84, :10].set(params["w5"].T)
    b5p = jnp.zeros((1, CPAD), f32).at[0, :10].set(params["b5"])

    return dict(w1=w1p, b1=b1p, w2=w2p, b2=b2p, w3=w3p, b3=b3p,
                w4=w4p, b4=b4p, w5=w5p, b5=b5p)


# ------------------------------ input packing -------------------------------

def make_patches(x, bp):
    """x: (B,1,28,28) -> conv1 im2col patches, rows ordered (block, oh, ow, b)."""
    b = x.shape[0]
    x2 = x[:, 0]                                                        # (B, 28, 28)
    cols = [x2[:, kh:kh + 24, kw:kw + 24] for kh in range(5) for kw in range(5)]
    p = jnp.stack(cols, axis=-1)                                        # (B, 24, 24, 25)
    p = jnp.pad(p, ((0, bp - b), (0, 0), (0, 0), (0, 32 - 25)))         # (Bp,24,24,32)
    p = p.reshape(bp // SUB, SUB, 24, 24, 32).transpose(0, 2, 3, 1, 4)  # (G,oh,ow,b,32)
    return p.reshape(bp * 24 * 24, 32)


# ------------------------------- forward pass -------------------------------

def lenet_forward(prep, x, y):
    """Mirrors LeNet.forward: summed cross-entropy (size_average=False)."""
    B = x.shape[0]
    G = pl.cdiv(B, SUB)
    Bp = G * SUB

    patches = make_patches(x, Bp)                                       # (G*4608, 32)
    yv = jnp.pad(y.astype(jnp.int32), (0, Bp - B),
                 constant_values=-1).reshape(Bp, 1)

    const2 = lambda i: (0, 0)
    const3 = lambda i: (0, 0, 0)
    out = pl.pallas_call(
        lenet_fused_kernel,
        out_shape=jax.ShapeDtypeStruct((Bp, CPAD), jnp.float32),
        grid=(G,),
        in_specs=[
            pl.BlockSpec((24 * 24 * SUB, 32), lambda i: (i, 0)),   # patches
            pl.BlockSpec((SUB, 1), lambda i: (i, 0)),              # labels
            pl.BlockSpec((32, CPAD), const2),                      # w1
            pl.BlockSpec((1, CPAD), const2),                       # b1
            pl.BlockSpec((25, CPAD, CPAD), const3),                # w2
            pl.BlockSpec((1, CPAD), const2),                       # b2
            pl.BlockSpec((16, CPAD, CPAD), const3),                # w3
            pl.BlockSpec((1, CPAD), const2),                       # b3
            pl.BlockSpec((CPAD, CPAD), const2),                    # w4
            pl.BlockSpec((1, CPAD), const2),                       # b4
            pl.BlockSpec((CPAD, CPAD), const2),                    # w5
            pl.BlockSpec((1, CPAD), const2),                       # b5
        ],
        out_specs=pl.BlockSpec((SUB, CPAD), lambda i: (i, 0)),
        compiler_params=pltpu.CompilerParams(
            dimension_semantics=("parallel",),
            vmem_limit_bytes=32 * 1024 * 1024,
        ),
    )(patches, yv, prep["w1"], prep["b1"], prep["w2"], prep["b2"],
      prep["w3"], prep["b3"], prep["w4"], prep["b4"], prep["w5"], prep["b5"])

    return jnp.sum(out[:, 0])      # padded rows contribute exactly 0
# TODO(synk): LeNet.diagnose (accuracy diagnostics) not implemented; fused loss only.


# ------------------------------- param init ---------------------------------

def init_lenet_params(key, num_classes=10):
    assert num_classes == 10, num_classes
    ks = jax.random.split(key, 10)
    s = 0.1
    return {
        "w1": jax.random.normal(ks[0], (6, 1, 5, 5), jnp.float32) * s,
        "b1": jax.random.normal(ks[1], (6,), jnp.float32) * s,
        "w2": jax.random.normal(ks[2], (16, 6, 5, 5), jnp.float32) * s,
        "b2": jax.random.normal(ks[3], (16,), jnp.float32) * s,
        "w3": jax.random.normal(ks[4], (120, 256), jnp.float32) * s,
        "b3": jax.random.normal(ks[5], (120,), jnp.float32) * s,
        "w4": jax.random.normal(ks[6], (84, 120), jnp.float32) * s,
        "b4": jax.random.normal(ks[7], (84,), jnp.float32) * s,
        "w5": jax.random.normal(ks[8], (10, 84), jnp.float32) * s,
        "b5": jax.random.normal(ks[9], (10,), jnp.float32) * s,
    }


# ---------------------------- pure-JAX reference ----------------------------

def reference_forward(params, x, y):
    def conv(x, w, b):
        o = jax.lax.conv_general_dilated(
            x, w, (1, 1), "VALID",
            dimension_numbers=("NCHW", "OIHW", "NCHW"))
        return o + b[None, :, None, None]

    def pool(x):
        N, C, H, W = x.shape
        return x.reshape(N, C, H // 2, 2, W // 2, 2).max(axis=(3, 5))

    h = pool(jax.nn.relu(conv(x, params["w1"], params["b1"])))
    h = pool(jax.nn.relu(conv(h, params["w2"], params["b2"])))
    h = h.reshape(h.shape[0], -1)
    h = jax.nn.relu(h @ params["w3"].T + params["b3"])
    h = jax.nn.relu(h @ params["w4"].T + params["b4"])
    logits = h @ params["w5"].T + params["b5"]
    logp = jax.nn.log_softmax(logits, axis=-1)
    return -jnp.sum(logp[jnp.arange(y.shape[0]), y])


# ----------------------------------- main ------------------------------------

if __name__ == "__main__":
    key = jax.random.PRNGKey(0)
    kp, kx, ky = jax.random.split(key, 3)

    params = init_lenet_params(kp, num_classes=10)
    x = jax.random.normal(kx, (2, 1, 28, 28), jnp.float32)   # NCHW, 28x28 MNIST-style
    y = jax.random.randint(ky, (2,), 0, 10, jnp.int32)

    prep = prepare_params(params)          # one-time weight repack (not in hot path)
    loss_fn = jax.jit(lenet_forward)
    loss = jax.block_until_ready(loss_fn(prep, x, y))

    ref = reference_forward(params, x, y)
    assert jnp.allclose(loss, ref, rtol=1e-2, atol=1e-2), (loss, ref)

    print("KERNEL_OK")
</pallas_src>

<mosaic_0001>
module attributes {stable_mosaic.version = 11 : i64} {
  func.func @lenet_fused_kernel(%arg0: i32, %arg1: memref<4608x32xf32, #tpu.memory_space<vmem>>, %arg2: memref<8x1xi32, #tpu.memory_space<vmem>>, %arg3: memref<32x128xf32, #tpu.memory_space<vmem>>, %arg4: memref<1x128xf32, #tpu.memory_space<vmem>>, %arg5: memref<25x128x128xf32, #tpu.memory_space<vmem>>, %arg6: memref<1x128xf32, #tpu.memory_space<vmem>>, %arg7: memref<16x128x128xf32, #tpu.memory_space<vmem>>, %arg8: memref<1x128xf32, #tpu.memory_space<vmem>>, %arg9: memref<128x128xf32, #tpu.memory_space<vmem>>, %arg10: memref<1x128xf32, #tpu.memory_space<vmem>>, %arg11: memref<128x128xf32, #tpu.memory_space<vmem>>, %arg12: memref<1x128xf32, #tpu.memory_space<vmem>>, %arg13: memref<8x128xf32, #tpu.memory_space<vmem>>) attributes {dimension_semantics = [#tpu.dimension_semantics<parallel>], iteration_bounds = array<i64: 1>, scalar_prefetch = 0 : i64, scratch_operands = 0 : i64, tpu.core_type = #tpu.core_type<tc>, window_params = [{transform_indices = @transform_0, window_bounds = array<i64: 4608, 32>}, {transform_indices = @transform_1, window_bounds = array<i64: 8, 1>}, {pipeline_mode = #tpu.pipeline_mode<synchronous>, transform_indices = @transform_2, window_bounds = array<i64: 32, 128>}, {pipeline_mode = #tpu.pipeline_mode<synchronous>, transform_indices = @transform_3, window_bounds = array<i64: 1, 128>}, {pipeline_mode = #tpu.pipeline_mode<synchronous>, transform_indices = @transform_4, window_bounds = array<i64: 25, 128, 128>}, {pipeline_mode = #tpu.pipeline_mode<synchronous>, transform_indices = @transform_5, window_bounds = array<i64: 1, 128>}, {pipeline_mode = #tpu.pipeline_mode<synchronous>, transform_indices = @transform_6, window_bounds = array<i64: 16, 128, 128>}, {pipeline_mode = #tpu.pipeline_mode<synchronous>, transform_indices = @transform_7, window_bounds = array<i64: 1, 128>}, {pipeline_mode = #tpu.pipeline_mode<synchronous>, transform_indices = @transform_8, window_bounds = array<i64: 128, 128>}, {pipeline_mode = #tpu.pipeline_mode<synchronous>, transform_indices = @transform_9, window_bounds = array<i64: 1, 128>}, {pipeline_mode = #tpu.pipeline_mode<synchronous>, transform_indices = @transform_10, window_bounds = array<i64: 128, 128>}, {pipeline_mode = #tpu.pipeline_mode<synchronous>, transform_indices = @transform_11, window_bounds = array<i64: 1, 128>}, {transform_indices = @transform_12, window_bounds = array<i64: 8, 128>}]} {
    %c0 = arith.constant 0 : index
    %c0_0 = arith.constant 0 : index
    %0 = vector.load %arg1[%c0, %c0_0] : memref<4608x32xf32, #tpu.memory_space<vmem>>, vector<4608x32xf32>
    %c0_1 = arith.constant 0 : index
    %c0_2 = arith.constant 0 : index
    %1 = vector.load %arg3[%c0_1, %c0_2] : memref<32x128xf32, #tpu.memory_space<vmem>>, vector<32x128xf32>
    %cst = arith.constant dense<0.000000e+00> : vector<4608x128xf32>
    %2 = tpu.matmul %0, %1, %cst {dimension_numbers = #tpu.dot_dimension_numbers<[1], [0], [0], [1], [0, 0, 1, 1], [], []>} : vector<4608x32xf32>, vector<32x128xf32>, vector<4608x128xf32> -> vector<4608x128xf32>
    %c0_3 = arith.constant 0 : index
    %c0_4 = arith.constant 0 : index
    %3 = vector.load %arg4[%c0_3, %c0_4] : memref<1x128xf32, #tpu.memory_space<vmem>>, vector<1x128xf32>
    %4 = vector.broadcast %3 : vector<1x128xf32> to vector<4608x128xf32>
    %5 = arith.addf %2, %4 : vector<4608x128xf32>
    %cst_5 = arith.constant 0.000000e+00 : f32
    %6 = vector.broadcast %cst_5 : f32 to vector<4608x128xf32>
    %7 = arith.maximumf %5, %6 : vector<4608x128xf32>
    %8 = vector.shape_cast %7 : vector<4608x128xf32> to vector<24x24x8x128xf32>
    %9 = vector.shape_cast %8 : vector<24x24x8x128xf32> to vector<12x2x12x2x8x128xf32>
    %10 = vector.extract_strided_slice %9 {offsets = [0, 0, 0, 0, 0, 0], sizes = [12, 1, 12, 1, 8, 128], strides = [1, 1, 1, 1, 1, 1]} : vector<12x2x12x2x8x128xf32> to vector<12x1x12x1x8x128xf32>
    %11 = vector.shape_cast %10 : vector<12x1x12x1x8x128xf32> to vector<12x12x8x128xf32>
    %12 = vector.extract_strided_slice %9 {offsets = [0, 0, 0, 1, 0, 0], sizes = [12, 1, 12, 1, 8, 128], strides = [1, 1, 1, 1, 1, 1]} : vector<12x2x12x2x8x128xf32> to vector<12x1x12x1x8x128xf32>
    %13 = vector.shape_cast %12 : vector<12x1x12x1x8x128xf32> to vector<12x12x8x128xf32>
    %14 = arith.maximumf %11, %13 : vector<12x12x8x128xf32>
    %15 = vector.extract_strided_slice %9 {offsets = [0, 1, 0, 0, 0, 0], sizes = [12, 1, 12, 1, 8, 128], strides = [1, 1, 1, 1, 1, 1]} : vector<12x2x12x2x8x128xf32> to vector<12x1x12x1x8x128xf32>
    %16 = vector.shape_cast %15 : vector<12x1x12x1x8x128xf32> to vector<12x12x8x128xf32>
    %17 = vector.extract_strided_slice %9 {offsets = [0, 1, 0, 1, 0, 0], sizes = [12, 1, 12, 1, 8, 128], strides = [1, 1, 1, 1, 1, 1]} : vector<12x2x12x2x8x128xf32> to vector<12x1x12x1x8x128xf32>
    %18 = vector.shape_cast %17 : vector<12x1x12x1x8x128xf32> to vector<12x12x8x128xf32>
    %19 = arith.maximumf %16, %18 : vector<12x12x8x128xf32>
    %20 = arith.maximumf %14, %19 : vector<12x12x8x128xf32>
    %cst_6 = arith.constant 0.000000e+00 : f32
    %21 = vector.broadcast %cst_6 : f32 to vector<512x128xf32>
    %22 = vector.extract_strided_slice %20 {offsets = [0, 0, 0, 0], sizes = [8, 8, 8, 128], strides = [1, 1, 1, 1]} : vector<12x12x8x128xf32> to vector<8x8x8x128xf32>
    %23 = vector.shape_cast %22 : vector<8x8x8x128xf32> to vector<512x128xf32>
    %c0_7 = arith.constant 0 : index
    %c0_8 = arith.constant 0 : index
    %c0_9 = arith.constant 0 : index
    %24 = vector.load %arg5[%c0_7, %c0_8, %c0_9] : memref<25x128x128xf32, #tpu.memory_space<vmem>>, vector<1x128x128xf32>
    %25 = vector.shape_cast %24 : vector<1x128x128xf32> to vector<128x128xf32>
    %cst_10 = arith.constant dense<0.000000e+00> : vector<512x128xf32>
    %26 = tpu.matmul %23, %25, %cst_10 {dimension_numbers = #tpu.dot_dimension_numbers<[1], [0], [0], [1], [0, 0, 1, 1], [], []>} : vector<512x128xf32>, vector<128x128xf32>, vector<512x128xf32> -> vector<512x128xf32>
    %27 = arith.addf %21, %26 : vector<512x128xf32>
    %28 = vector.extract_strided_slice %20 {offsets = [0, 1, 0, 0], sizes = [8, 8, 8, 128], strides = [1, 1, 1, 1]} : vector<12x12x8x128xf32> to vector<8x8x8x128xf32>
    %29 = vector.shape_cast %28 : vector<8x8x8x128xf32> to vector<512x128xf32>
    %c1 = arith.constant 1 : index
    %c0_11 = arith.constant 0 : index
    %c0_12 = arith.constant 0 : index
    %30 = vector.load %arg5[%c1, %c0_11, %c0_12] : memref<25x128x128xf32, #tpu.memory_space<vmem>>, vector<1x128x128xf32>
    %31 = vector.shape_cast %30 : vector<1x128x128xf32> to vector<128x128xf32>
    %cst_13 = arith.constant dense<0.000000e+00> : vector<512x128xf32>
    %32 = tpu.matmul %29, %31, %cst_13 {dimension_numbers = #tpu.dot_dimension_numbers<[1], [0], [0], [1], [0, 0, 1, 1], [], []>} : vector<512x128xf32>, vector<128x128xf32>, vector<512x128xf32> -> vector<512x128xf32>
    %33 = arith.addf %27, %32 : vector<512x128xf32>
    %34 = vector.extract_strided_slice %20 {offsets = [0, 2, 0, 0], sizes = [8, 8, 8, 128], strides = [1, 1, 1, 1]} : vector<12x12x8x128xf32> to vector<8x8x8x128xf32>
    %35 = vector.shape_cast %34 : vector<8x8x8x128xf32> to vector<512x128xf32>
    %c2 = arith.constant 2 : index
    %c0_14 = arith.constant 0 : index
    %c0_15 = arith.constant 0 : index
    %36 = vector.load %arg5[%c2, %c0_14, %c0_15] : memref<25x128x128xf32, #tpu.memory_space<vmem>>, vector<1x128x128xf32>
    %37 = vector.shape_cast %36 : vector<1x128x128xf32> to vector<128x128xf32>
    %cst_16 = arith.constant dense<0.000000e+00> : vector<512x128xf32>
    %38 = tpu.matmul %35, %37, %cst_16 {dimension_numbers = #tpu.dot_dimension_numbers<[1], [0], [0], [1], [0, 0, 1, 1], [], []>} : vector<512x128xf32>, vector<128x128xf32>, vector<512x128xf32> -> vector<512x128xf32>
    %39 = arith.addf %33, %38 : vector<512x128xf32>
    %40 = vector.extract_strided_slice %20 {offsets = [0, 3, 0, 0], sizes = [8, 8, 8, 128], strides = [1, 1, 1, 1]} : vector<12x12x8x128xf32> to vector<8x8x8x128xf32>
    %41 = vector.shape_cast %40 : vector<8x8x8x128xf32> to vector<512x128xf32>
    %c3 = arith.constant 3 : index
    %c0_17 = arith.constant 0 : index
    %c0_18 = arith.constant 0 : index
    %42 = vector.load %arg5[%c3, %c0_17, %c0_18] : memref<25x128x128xf32, #tpu.memory_space<vmem>>, vector<1x128x128xf32>
    %43 = vector.shape_cast %42 : vector<1x128x128xf32> to vector<128x128xf32>
    %cst_19 = arith.constant dense<0.000000e+00> : vector<512x128xf32>
    %44 = tpu.matmul %41, %43, %cst_19 {dimension_numbers = #tpu.dot_dimension_numbers<[1], [0], [0], [1], [0, 0, 1, 1], [], []>} : vector<512x128xf32>, vector<128x128xf32>, vector<512x128xf32> -> vector<512x128xf32>
    %45 = arith.addf %39, %44 : vector<512x128xf32>
    %46 = vector.extract_strided_slice %20 {offsets = [0, 4, 0, 0], sizes = [8, 8, 8, 128], strides = [1, 1, 1, 1]} : vector<12x12x8x128xf32> to vector<8x8x8x128xf32>
    %47 = vector.shape_cast %46 : vector<8x8x8x128xf32> to vector<512x128xf32>
    %c4 = arith.constant 4 : index
    %c0_20 = arith.constant 0 : index
    %c0_21 = arith.constant 0 : index
    %48 = vector.load %arg5[%c4, %c0_20, %c0_21] : memref<25x128x128xf32, #tpu.memory_space<vmem>>, vector<1x128x128xf32>
    %49 = vector.shape_cast %48 : vector<1x128x128xf32> to vector<128x128xf32>
    %cst_22 = arith.constant dense<0.000000e+00> : vector<512x128xf32>
    %50 = tpu.matmul %47, %49, %cst_22 {dimension_numbers = #tpu.dot_dimension_numbers<[1], [0], [0], [1], [0, 0, 1, 1], [], []>} : vector<512x128xf32>, vector<128x128xf32>, vector<512x128xf32> -> vector<512x128xf32>
    %51 = arith.addf %45, %50 : vector<512x128xf32>
    %52 = vector.extract_strided_slice %20 {offsets = [1, 0, 0, 0], sizes = [8, 8, 8, 128], strides = [1, 1, 1, 1]} : vector<12x12x8x128xf32> to vector<8x8x8x128xf32>
    %53 = vector.shape_cast %52 : vector<8x8x8x128xf32> to vector<512x128xf32>
    %c5 = arith.constant 5 : index
    %c0_23 = arith.constant 0 : index
    %c0_24 = arith.constant 0 : index
    %54 = vector.load %arg5[%c5, %c0_23, %c0_24] : memref<25x128x128xf32, #tpu.memory_space<vmem>>, vector<1x128x128xf32>
    %55 = vector.shape_cast %54 : vector<1x128x128xf32> to vector<128x128xf32>
    %cst_25 = arith.constant dense<0.000000e+00> : vector<512x128xf32>
    %56 = tpu.matmul %53, %55, %cst_25 {dimension_numbers = #tpu.dot_dimension_numbers<[1], [0], [0], [1], [0, 0, 1, 1], [], []>} : vector<512x128xf32>, vector<128x128xf32>, vector<512x128xf32> -> vector<512x128xf32>
    %57 = arith.addf %51, %56 : vector<512x128xf32>
    %58 = vector.extract_strided_slice %20 {offsets = [1, 1, 0, 0], sizes = [8, 8, 8, 128], strides = [1, 1, 1, 1]} : vector<12x12x8x128xf32> to vector<8x8x8x128xf32>
    %59 = vector.shape_cast %58 : vector<8x8x8x128xf32> to vector<512x128xf32>
    %c6 = arith.constant 6 : index
    %c0_26 = arith.constant 0 : index
    %c0_27 = arith.constant 0 : index
    %60 = vector.load %arg5[%c6, %c0_26, %c0_27] : memref<25x128x128xf32, #tpu.memory_space<vmem>>, vector<1x128x128xf32>
    %61 = vector.shape_cast %60 : vector<1x128x128xf32> to vector<128x128xf32>
    %cst_28 = arith.constant dense<0.000000e+00> : vector<512x128xf32>
    %62 = tpu.matmul %59, %61, %cst_28 {dimension_numbers = #tpu.dot_dimension_numbers<[1], [0], [0], [1], [0, 0, 1, 1], [], []>} : vector<512x128xf32>, vector<128x128xf32>, vector<512x128xf32> -> vector<512x128xf32>
    %63 = arith.addf %57, %62 : vector<512x128xf32>
    %64 = vector.extract_strided_slice %20 {offsets = [1, 2, 0, 0], sizes = [8, 8, 8, 128], strides = [1, 1, 1, 1]} : vector<12x12x8x128xf32> to vector<8x8x8x128xf32>
    %65 = vector.shape_cast %64 : vector<8x8x8x128xf32> to vector<512x128xf32>
    %c7 = arith.constant 7 : index
    %c0_29 = arith.constant 0 : index
    %c0_30 = arith.constant 0 : index
    %66 = vector.load %arg5[%c7, %c0_29, %c0_30] : memref<25x128x128xf32, #tpu.memory_space<vmem>>, vector<1x128x128xf32>
    %67 = vector.shape_cast %66 : vector<1x128x128xf32> to vector<128x128xf32>
    %cst_31 = arith.constant dense<0.000000e+00> : vector<512x128xf32>
    %68 = tpu.matmul %65, %67, %cst_31 {dimension_numbers = #tpu.dot_dimension_numbers<[1], [0], [0], [1], [0, 0, 1, 1], [], []>} : vector<512x128xf32>, vector<128x128xf32>, vector<512x128xf32> -> vector<512x128xf32>
    %69 = arith.addf %63, %68 : vector<512x128xf32>
    %70 = vector.extract_strided_slice %20 {offsets = [1, 3, 0, 0], sizes = [8, 8, 8, 128], strides = [1, 1, 1, 1]} : vector<12x12x8x128xf32> to vector<8x8x8x128xf32>
    %71 = vector.shape_cast %70 : vector<8x8x8x128xf32> to vector<512x128xf32>
    %c8 = arith.constant 8 : index
    %c0_32 = arith.constant 0 : index
    %c0_33 = arith.constant 0 : index
    %72 = vector.load %arg5[%c8, %c0_32, %c0_33] : memref<25x128x128xf32, #tpu.memory_space<vmem>>, vector<1x128x128xf32>
    %73 = vector.shape_cast %72 : vector<1x128x128xf32> to vector<128x128xf32>
    %cst_34 = arith.constant dense<0.000000e+00> : vector<512x128xf32>
    %74 = tpu.matmul %71, %73, %cst_34 {dimension_numbers = #tpu.dot_dimension_numbers<[1], [0], [0], [1], [0, 0, 1, 1], [], []>} : vector<512x128xf32>, vector<128x128xf32>, vector<512x128xf32> -> vector<512x128xf32>
    %75 = arith.addf %69, %74 : vector<512x128xf32>
    %76 = vector.extract_strided_slice %20 {offsets = [1, 4, 0, 0], sizes = [8, 8, 8, 128], strides = [1, 1, 1, 1]} : vector<12x12x8x128xf32> to vector<8x8x8x128xf32>
    %77 = vector.shape_cast %76 : vector<8x8x8x128xf32> to vector<512x128xf32>
    %c9 = arith.constant 9 : index
    %c0_35 = arith.constant 0 : index
    %c0_36 = arith.constant 0 : index
    %78 = vector.load %arg5[%c9, %c0_35, %c0_36] : memref<25x128x128xf32, #tpu.memory_space<vmem>>, vector<1x128x128xf32>
    %79 = vector.shape_cast %78 : vector<1x128x128xf32> to vector<128x128xf32>
    %cst_37 = arith.constant dense<0.000000e+00> : vector<512x128xf32>
    %80 = tpu.matmul %77, %79, %cst_37 {dimension_numbers = #tpu.dot_dimension_numbers<[1], [0], [0], [1], [0, 0, 1, 1], [], []>} : vector<512x128xf32>, vector<128x128xf32>, vector<512x128xf32> -> vector<512x128xf32>
    %81 = arith.addf %75, %80 : vector<512x128xf32>
    %82 = vector.extract_strided_slice %20 {offsets = [2, 0, 0, 0], sizes = [8, 8, 8, 128], strides = [1, 1, 1, 1]} : vector<12x12x8x128xf32> to vector<8x8x8x128xf32>
    %83 = vector.shape_cast %82 : vector<8x8x8x128xf32> to vector<512x128xf32>
    %c10 = arith.constant 10 : index
    %c0_38 = arith.constant 0 : index
    %c0_39 = arith.constant 0 : index
    %84 = vector.load %arg5[%c10, %c0_38, %c0_39] : memref<25x128x128xf32, #tpu.memory_space<vmem>>, vector<1x128x128xf32>
    %85 = vector.shape_cast %84 : vector<1x128x128xf32> to vector<128x128xf32>
    %cst_40 = arith.constant dense<0.000000e+00> : vector<512x128xf32>
    %86 = tpu.matmul %83, %85, %cst_40 {dimension_numbers = #tpu.dot_dimension_numbers<[1], [0], [0], [1], [0, 0, 1, 1], [], []>} : vector<512x128xf32>, vector<128x128xf32>, vector<512x128xf32> -> vector<512x128xf32>
    %87 = arith.addf %81, %86 : vector<512x128xf32>
    %88 = vector.extract_strided_slice %20 {offsets = [2, 1, 0, 0], sizes = [8, 8, 8, 128], strides = [1, 1, 1, 1]} : vector<12x12x8x128xf32> to vector<8x8x8x128xf32>
    %89 = vector.shape_cast %88 : vector<8x8x8x128xf32> to vector<512x128xf32>
    %c11 = arith.constant 11 : index
    %c0_41 = arith.constant 0 : index
    %c0_42 = arith.constant 0 : index
    %90 = vector.load %arg5[%c11, %c0_41, %c0_42] : memref<25x128x128xf32, #tpu.memory_space<vmem>>, vector<1x128x128xf32>
    %91 = vector.shape_cast %90 : vector<1x128x128xf32> to vector<128x128xf32>
    %cst_43 = arith.constant dense<0.000000e+00> : vector<512x128xf32>
    %92 = tpu.matmul %89, %91, %cst_43 {dimension_numbers = #tpu.dot_dimension_numbers<[1], [0], [0], [1], [0, 0, 1, 1], [], []>} : vector<512x128xf32>, vector<128x128xf32>, vector<512x128xf32> -> vector<512x128xf32>
    %93 = arith.addf %87, %92 : vector<512x128xf32>
    %94 = vector.extract_strided_slice %20 {offsets = [2, 2, 0, 0], sizes = [8, 8, 8, 128], strides = [1, 1, 1, 1]} : vector<12x12x8x128xf32> to vector<8x8x8x128xf32>
    %95 = vector.shape_cast %94 : vector<8x8x8x128xf32> to vector<512x128xf32>
    %c12 = arith.constant 12 : index
    %c0_44 = arith.constant 0 : index
    %c0_45 = arith.constant 0 : index
    %96 = vector.load %arg5[%c12, %c0_44, %c0_45] : memref<25x128x128xf32, #tpu.memory_space<vmem>>, vector<1x128x128xf32>
    %97 = vector.shape_cast %96 : vector<1x128x128xf32> to vector<128x128xf32>
    %cst_46 = arith.constant dense<0.000000e+00> : vector<512x128xf32>
    %98 = tpu.matmul %95, %97, %cst_46 {dimension_numbers = #tpu.dot_dimension_numbers<[1], [0], [0], [1], [0, 0, 1, 1], [], []>} : vector<512x128xf32>, vector<128x128xf32>, vector<512x128xf32> -> vector<512x128xf32>
    %99 = arith.addf %93, %98 : vector<512x128xf32>
    %100 = vector.extract_strided_slice %20 {offsets = [2, 3, 0, 0], sizes = [8, 8, 8, 128], strides = [1, 1, 1, 1]} : vector<12x12x8x128xf32> to vector<8x8x8x128xf32>
    %101 = vector.shape_cast %100 : vector<8x8x8x128xf32> to vector<512x128xf32>
    %c13 = arith.constant 13 : index
    %c0_47 = arith.constant 0 : index
    %c0_48 = arith.constant 0 : index
    %102 = vector.load %arg5[%c13, %c0_47, %c0_48] : memref<25x128x128xf32, #tpu.memory_space<vmem>>, vector<1x128x128xf32>
    %103 = vector.shape_cast %102 : vector<1x128x128xf32> to vector<128x128xf32>
    %cst_49 = arith.constant dense<0.000000e+00> : vector<512x128xf32>
    %104 = tpu.matmul %101, %103, %cst_49 {dimension_numbers = #tpu.dot_dimension_numbers<[1], [0], [0], [1], [0, 0, 1, 1], [], []>} : vector<512x128xf32>, vector<128x128xf32>, vector<512x128xf32> -> vector<512x128xf32>
    %105 = arith.addf %99, %104 : vector<512x128xf32>
    %106 = vector.extract_strided_slice %20 {offsets = [2, 4, 0, 0], sizes = [8, 8, 8, 128], strides = [1, 1, 1, 1]} : vector<12x12x8x128xf32> to vector<8x8x8x128xf32>
    %107 = vector.shape_cast %106 : vector<8x8x8x128xf32> to vector<512x128xf32>
    %c14 = arith.constant 14 : index
    %c0_50 = arith.constant 0 : index
    %c0_51 = arith.constant 0 : index
    %108 = vector.load %arg5[%c14, %c0_50, %c0_51] : memref<25x128x128xf32, #tpu.memory_space<vmem>>, vector<1x128x128xf32>
    %109 = vector.shape_cast %108 : vector<1x128x128xf32> to vector<128x128xf32>
    %cst_52 = arith.constant dense<0.000000e+00> : vector<512x128xf32>
    %110 = tpu.matmul %107, %109, %cst_52 {dimension_numbers = #tpu.dot_dimension_numbers<[1], [0], [0], [1], [0, 0, 1, 1], [], []>} : vector<512x128xf32>, vector<128x128xf32>, vector<512x128xf32> -> vector<512x128xf32>
    %111 = arith.addf %105, %110 : vector<512x128xf32>
    %112 = vector.extract_strided_slice %20 {offsets = [3, 0, 0, 0], sizes = [8, 8, 8, 128], strides = [1, 1, 1, 1]} : vector<12x12x8x128xf32> to vector<8x8x8x128xf32>
    %113 = vector.shape_cast %112 : vector<8x8x8x128xf32> to vector<512x128xf32>
    %c15 = arith.constant 15 : index
    %c0_53 = arith.constant 0 : index
    %c0_54 = arith.constant 0 : index
    %114 = vector.load %arg5[%c15, %c0_53, %c0_54] : memref<25x128x128xf32, #tpu.memory_space<vmem>>, vector<1x128x128xf32>
    %115 = vector.shape_cast %114 : vector<1x128x128xf32> to vector<128x128xf32>
    %cst_55 = arith.constant dense<0.000000e+00> : vector<512x128xf32>
    %116 = tpu.matmul %113, %115, %cst_55 {dimension_numbers = #tpu.dot_dimension_numbers<[1], [0], [0], [1], [0, 0, 1, 1], [], []>} : vector<512x128xf32>, vector<128x128xf32>, vector<512x128xf32> -> vector<512x128xf32>
    %117 = arith.addf %111, %116 : vector<512x128xf32>
    %118 = vector.extract_strided_slice %20 {offsets = [3, 1, 0, 0], sizes = [8, 8, 8, 128], strides = [1, 1, 1, 1]} : vector<12x12x8x128xf32> to vector<8x8x8x128xf32>
    %119 = vector.shape_cast %118 : vector<8x8x8x128xf32> to vector<512x128xf32>
    %c16 = arith.constant 16 : index
    %c0_56 = arith.constant 0 : index
    %c0_57 = arith.constant 0 : index
    %120 = vector.load %arg5[%c16, %c0_56, %c0_57] : memref<25x128x128xf32, #tpu.memory_space<vmem>>, vector<1x128x128xf32>
    %121 = vector.shape_cast %120 : vector<1x128x128xf32> to vector<128x128xf32>
    %cst_58 = arith.constant dense<0.000000e+00> : vector<512x128xf32>
    %122 = tpu.matmul %119, %121, %cst_58 {dimension_numbers = #tpu.dot_dimension_numbers<[1], [0], [0], [1], [0, 0, 1, 1], [], []>} : vector<512x128xf32>, vector<128x128xf32>, vector<512x128xf32> -> vector<512x128xf32>
    %123 = arith.addf %117, %122 : vector<512x128xf32>
    %124 = vector.extract_strided_slice %20 {offsets = [3, 2, 0, 0], sizes = [8, 8, 8, 128], strides = [1, 1, 1, 1]} : vector<12x12x8x128xf32> to vector<8x8x8x128xf32>
    %125 = vector.shape_cast %124 : vector<8x8x8x128xf32> to vector<512x128xf32>
    %c17 = arith.constant 17 : index
    %c0_59 = arith.constant 0 : index
    %c0_60 = arith.constant 0 : index
    %126 = vector.load %arg5[%c17, %c0_59, %c0_60] : memref<25x128x128xf32, #tpu.memory_space<vmem>>, vector<1x128x128xf32>
    %127 = vector.shape_cast %126 : vector<1x128x128xf32> to vector<128x128xf32>
    %cst_61 = arith.constant dense<0.000000e+00> : vector<512x128xf32>
    %128 = tpu.matmul %125, %127, %cst_61 {dimension_numbers = #tpu.dot_dimension_numbers<[1], [0], [0], [1], [0, 0, 1, 1], [], []>} : vector<512x128xf32>, vector<128x128xf32>, vector<512x128xf32> -> vector<512x128xf32>
    %129 = arith.addf %123, %128 : vector<512x128xf32>
    %130 = vector.extract_strided_slice %20 {offsets = [3, 3, 0, 0], sizes = [8, 8, 8, 128], strides = [1, 1, 1, 1]} : vector<12x12x8x128xf32> to vector<8x8x8x128xf32>
    %131 = vector.shape_cast %130 : vector<8x8x8x128xf32> to vector<512x128xf32>
    %c18 = arith.constant 18 : index
    %c0_62 = arith.constant 0 : index
    %c0_63 = arith.constant 0 : index
    %132 = vector.load %arg5[%c18, %c0_62, %c0_63] : memref<25x128x128xf32, #tpu.memory_space<vmem>>, vector<1x128x128xf32>
    %133 = vector.shape_cast %132 : vector<1x128x128xf32> to vector<128x128xf32>
    %cst_64 = arith.constant dense<0.000000e+00> : vector<512x128xf32>
    %134 = tpu.matmul %131, %133, %cst_64 {dimension_numbers = #tpu.dot_dimension_numbers<[1], [0], [0], [1], [0, 0, 1, 1], [], []>} : vector<512x128xf32>, vector<128x128xf32>, vector<512x128xf32> -> vector<512x128xf32>
    %135 = arith.addf %129, %134 : vector<512x128xf32>
    %136 = vector.extract_strided_slice %20 {offsets = [3, 4, 0, 0], sizes = [8, 8, 8, 128], strides = [1, 1, 1, 1]} : vector<12x12x8x128xf32> to vector<8x8x8x128xf32>
    %137 = vector.shape_cast %136 : vector<8x8x8x128xf32> to vector<512x128xf32>
    %c19 = arith.constant 19 : index
    %c0_65 = arith.constant 0 : index
    %c0_66 = arith.constant 0 : index
    %138 = vector.load %arg5[%c19, %c0_65, %c0_66] : memref<25x128x128xf32, #tpu.memory_space<vmem>>, vector<1x128x128xf32>
    %139 = vector.shape_cast %138 : vector<1x128x128xf32> to vector<128x128xf32>
    %cst_67 = arith.constant dense<0.000000e+00> : vector<512x128xf32>
    %140 = tpu.matmul %137, %139, %cst_67 {dimension_numbers = #tpu.dot_dimension_numbers<[1], [0], [0], [1], [0, 0, 1, 1], [], []>} : vector<512x128xf32>, vector<128x128xf32>, vector<512x128xf32> -> vector<512x128xf32>
    %141 = arith.addf %135, %140 : vector<512x128xf32>
    %142 = vector.extract_strided_slice %20 {offsets = [4, 0, 0, 0], sizes = [8, 8, 8, 128], strides = [1, 1, 1, 1]} : vector<12x12x8x128xf32> to vector<8x8x8x128xf32>
    %143 = vector.shape_cast %142 : vector<8x8x8x128xf32> to vector<512x128xf32>
    %c20 = arith.constant 20 : index
    %c0_68 = arith.constant 0 : index
    %c0_69 = arith.constant 0 : index
    %144 = vector.load %arg5[%c20, %c0_68, %c0_69] : memref<25x128x128xf32, #tpu.memory_space<vmem>>, vector<1x128x128xf32>
    %145 = vector.shape_cast %144 : vector<1x128x128xf32> to vector<128x128xf32>
    %cst_70 = arith.constant dense<0.000000e+00> : vector<512x128xf32>
    %146 = tpu.matmul %143, %145, %cst_70 {dimension_numbers = #tpu.dot_dimension_numbers<[1], [0], [0], [1], [0, 0, 1, 1], [], []>} : vector<512x128xf32>, vector<128x128xf32>, vector<512x128xf32> -> vector<512x128xf32>
    %147 = arith.addf %141, %146 : vector<512x128xf32>
    %148 = vector.extract_strided_slice %20 {offsets = [4, 1, 0, 0], sizes = [8, 8, 8, 128], strides = [1, 1, 1, 1]} : vector<12x12x8x128xf32> to vector<8x8x8x128xf32>
    %149 = vector.shape_cast %148 : vector<8x8x8x128xf32> to vector<512x128xf32>
    %c21 = arith.constant 21 : index
    %c0_71 = arith.constant 0 : index
    %c0_72 = arith.constant 0 : index
    %150 = vector.load %arg5[%c21, %c0_71, %c0_72] : memref<25x128x128xf32, #tpu.memory_space<vmem>>, vector<1x128x128xf32>
    %151 = vector.shape_cast %150 : vector<1x128x128xf32> to vector<128x128xf32>
    %cst_73 = arith.constant dense<0.000000e+00> : vector<512x128xf32>
    %152 = tpu.matmul %149, %151, %cst_73 {dimension_numbers = #tpu.dot_dimension_numbers<[1], [0], [0], [1], [0, 0, 1, 1], [], []>} : vector<512x128xf32>, vector<128x128xf32>, vector<512x128xf32> -> vector<512x128xf32>
    %153 = arith.addf %147, %152 : vector<512x128xf32>
    %154 = vector.extract_strided_slice %20 {offsets = [4, 2, 0, 0], sizes = [8, 8, 8, 128], strides = [1, 1, 1, 1]} : vector<12x12x8x128xf32> to vector<8x8x8x128xf32>
    %155 = vector.shape_cast %154 : vector<8x8x8x128xf32> to vector<512x128xf32>
    %c22 = arith.constant 22 : index
    %c0_74 = arith.constant 0 : index
    %c0_75 = arith.constant 0 : index
    %156 = vector.load %arg5[%c22, %c0_74, %c0_75] : memref<25x128x128xf32, #tpu.memory_space<vmem>>, vector<1x128x128xf32>
    %157 = vector.shape_cast %156 : vector<1x128x128xf32> to vector<128x128xf32>
    %cst_76 = arith.constant dense<0.000000e+00> : vector<512x128xf32>
    %158 = tpu.matmul %155, %157, %cst_76 {dimension_numbers = #tpu.dot_dimension_numbers<[1], [0], [0], [1], [0, 0, 1, 1], [], []>} : vector<512x128xf32>, vector<128x128xf32>, vector<512x128xf32> -> vector<512x128xf32>
    %159 = arith.addf %153, %158 : vector<512x128xf32>
    %160 = vector.extract_strided_slice %20 {offsets = [4, 3, 0, 0], sizes = [8, 8, 8, 128], strides = [1, 1, 1, 1]} : vector<12x12x8x128xf32> to vector<8x8x8x128xf32>
    %161 = vector.shape_cast %160 : vector<8x8x8x128xf32> to vector<512x128xf32>
    %c23 = arith.constant 23 : index
    %c0_77 = arith.constant 0 : index
    %c0_78 = arith.constant 0 : index
    %162 = vector.load %arg5[%c23, %c0_77, %c0_78] : memref<25x128x128xf32, #tpu.memory_space<vmem>>, vector<1x128x128xf32>
    %163 = vector.shape_cast %162 : vector<1x128x128xf32> to vector<128x128xf32>
    %cst_79 = arith.constant dense<0.000000e+00> : vector<512x128xf32>
    %164 = tpu.matmul %161, %163, %cst_79 {dimension_numbers = #tpu.dot_dimension_numbers<[1], [0], [0], [1], [0, 0, 1, 1], [], []>} : vector<512x128xf32>, vector<128x128xf32>, vector<512x128xf32> -> vector<512x128xf32>
    %165 = arith.addf %159, %164 : vector<512x128xf32>
    %166 = vector.extract_strided_slice %20 {offsets = [4, 4, 0, 0], sizes = [8, 8, 8, 128], strides = [1, 1, 1, 1]} : vector<12x12x8x128xf32> to vector<8x8x8x128xf32>
    %167 = vector.shape_cast %166 : vector<8x8x8x128xf32> to vector<512x128xf32>
    %c24 = arith.constant 24 : index
    %c0_80 = arith.constant 0 : index
    %c0_81 = arith.constant 0 : index
    %168 = vector.load %arg5[%c24, %c0_80, %c0_81] : memref<25x128x128xf32, #tpu.memory_space<vmem>>, vector<1x128x128xf32>
    %169 = vector.shape_cast %168 : vector<1x128x128xf32> to vector<128x128xf32>
    %cst_82 = arith.constant dense<0.000000e+00> : vector<512x128xf32>
    %170 = tpu.matmul %167, %169, %cst_82 {dimension_numbers = #tpu.dot_dimension_numbers<[1], [0], [0], [1], [0, 0, 1, 1], [], []>} : vector<512x128xf32>, vector<128x128xf32>, vector<512x128xf32> -> vector<512x128xf32>
    %171 = arith.addf %165, %170 : vector<512x128xf32>
    %c0_83 = arith.constant 0 : index
    %c0_84 = arith.constant 0 : index
    %172 = vector.load %arg6[%c0_83, %c0_84] : memref<1x128xf32, #tpu.memory_space<vmem>>, vector<1x128xf32>
    %173 = vector.broadcast %172 : vector<1x128xf32> to vector<512x128xf32>
    %174 = arith.addf %171, %173 : vector<512x128xf32>
    %cst_85 = arith.constant 0.000000e+00 : f32
    %175 = vector.broadcast %cst_85 : f32 to vector<512x128xf32>
    %176 = arith.maximumf %174, %175 : vector<512x128xf32>
    %177 = vector.shape_cast %176 : vector<512x128xf32> to vector<8x8x8x128xf32>
    %178 = vector.shape_cast %177 : vector<8x8x8x128xf32> to vector<4x2x4x2x8x128xf32>
    %179 = vector.extract_strided_slice %178 {offsets = [0, 0, 0, 0, 0, 0], sizes = [4, 1, 4, 1, 8, 128], strides = [1, 1, 1, 1, 1, 1]} : vector<4x2x4x2x8x128xf32> to vector<4x1x4x1x8x128xf32>
    %180 = vector.shape_cast %179 : vector<4x1x4x1x8x128xf32> to vector<4x4x8x128xf32>
    %181 = vector.extract_strided_slice %178 {offsets = [0, 0, 0, 1, 0, 0], sizes = [4, 1, 4, 1, 8, 128], strides = [1, 1, 1, 1, 1, 1]} : vector<4x2x4x2x8x128xf32> to vector<4x1x4x1x8x128xf32>
    %182 = vector.shape_cast %181 : vector<4x1x4x1x8x128xf32> to vector<4x4x8x128xf32>
    %183 = arith.maximumf %180, %182 : vector<4x4x8x128xf32>
    %184 = vector.extract_strided_slice %178 {offsets = [0, 1, 0, 0, 0, 0], sizes = [4, 1, 4, 1, 8, 128], strides = [1, 1, 1, 1, 1, 1]} : vector<4x2x4x2x8x128xf32> to vector<4x1x4x1x8x128xf32>
    %185 = vector.shape_cast %184 : vector<4x1x4x1x8x128xf32> to vector<4x4x8x128xf32>
    %186 = vector.extract_strided_slice %178 {offsets = [0, 1, 0, 1, 0, 0], sizes = [4, 1, 4, 1, 8, 128], strides = [1, 1, 1, 1, 1, 1]} : vector<4x2x4x2x8x128xf32> to vector<4x1x4x1x8x128xf32>
    %187 = vector.shape_cast %186 : vector<4x1x4x1x8x128xf32> to vector<4x4x8x128xf32>
    %188 = arith.maximumf %185, %187 : vector<4x4x8x128xf32>
    %189 = arith.maximumf %183, %188 : vector<4x4x8x128xf32>
    %cst_86 = arith.constant 0.000000e+00 : f32
    %190 = vector.broadcast %cst_86 : f32 to vector<8x128xf32>
    %191 = vector.extract_strided_slice %189 {offsets = [0, 0, 0, 0], sizes = [1, 1, 8, 128], strides = [1, 1, 1, 1]} : vector<4x4x8x128xf32> to vector<1x1x8x128xf32>
    %192 = vector.shape_cast %191 : vector<1x1x8x128xf32> to vector<8x128xf32>
    %c0_87 = arith.constant 0 : index
    %c0_88 = arith.constant 0 : index
    %c0_89 = arith.constant 0 : index
    %193 = vector.load %arg7[%c0_87, %c0_88, %c0_89] : memref<16x128x128xf32, #tpu.memory_space<vmem>>, vector<1x128x128xf32>
    %194 = vector.shape_cast %193 : vector<1x128x128xf32> to vector<128x128xf32>
    %cst_90 = arith.constant dense<0.000000e+00> : vector<8x128xf32>
    %195 = tpu.matmul %192, %194, %cst_90 {dimension_numbers = #tpu.dot_dimension_numbers<[1], [0], [0], [1], [0, 0, 1, 1], [], []>} : vector<8x128xf32>, vector<128x128xf32>, vector<8x128xf32> -> vector<8x128xf32>
    %196 = arith.addf %190, %195 : vector<8x128xf32>
    %197 = vector.extract_strided_slice %189 {offsets = [0, 1, 0, 0], sizes = [1, 1, 8, 128], strides = [1, 1, 1, 1]} : vector<4x4x8x128xf32> to vector<1x1x8x128xf32>
    %198 = vector.shape_cast %197 : vector<1x1x8x128xf32> to vector<8x128xf32>
    %c1_91 = arith.constant 1 : index
    %c0_92 = arith.constant 0 : index
    %c0_93 = arith.constant 0 : index
    %199 = vector.load %arg7[%c1_91, %c0_92, %c0_93] : memref<16x128x128xf32, #tpu.memory_space<vmem>>, vector<1x128x128xf32>
    %200 = vector.shape_cast %199 : vector<1x128x128xf32> to vector<128x128xf32>
    %cst_94 = arith.constant dense<0.000000e+00> : vector<8x128xf32>
    %201 = tpu.matmul %198, %200, %cst_94 {dimension_numbers = #tpu.dot_dimension_numbers<[1], [0], [0], [1], [0, 0, 1, 1], [], []>} : vector<8x128xf32>, vector<128x128xf32>, vector<8x128xf32> -> vector<8x128xf32>
    %202 = arith.addf %196, %201 : vector<8x128xf32>
    %203 = vector.extract_strided_slice %189 {offsets = [0, 2, 0, 0], sizes = [1, 1, 8, 128], strides = [1, 1, 1, 1]} : vector<4x4x8x128xf32> to vector<1x1x8x128xf32>
    %204 = vector.shape_cast %203 : vector<1x1x8x128xf32> to vector<8x128xf32>
    %c2_95 = arith.constant 2 : index
    %c0_96 = arith.constant 0 : index
    %c0_97 = arith.constant 0 : index
    %205 = vector.load %arg7[%c2_95, %c0_96, %c0_97] : memref<16x128x128xf32, #tpu.memory_space<vmem>>, vector<1x128x128xf32>
    %206 = vector.shape_cast %205 : vector<1x128x128xf32> to vector<128x128xf32>
    %cst_98 = arith.constant dense<0.000000e+00> : vector<8x128xf32>
    %207 = tpu.matmul %204, %206, %cst_98 {dimension_numbers = #tpu.dot_dimension_numbers<[1], [0], [0], [1], [0, 0, 1, 1], [], []>} : vector<8x128xf32>, vector<128x128xf32>, vector<8x128xf32> -> vector<8x128xf32>
    %208 = arith.addf %202, %207 : vector<8x128xf32>
    %209 = vector.extract_strided_slice %189 {offsets = [0, 3, 0, 0], sizes = [1, 1, 8, 128], strides = [1, 1, 1, 1]} : vector<4x4x8x128xf32> to vector<1x1x8x128xf32>
    %210 = vector.shape_cast %209 : vector<1x1x8x128xf32> to vector<8x128xf32>
    %c3_99 = arith.constant 3 : index
    %c0_100 = arith.constant 0 : index
    %c0_101 = arith.constant 0 : index
    %211 = vector.load %arg7[%c3_99, %c0_100, %c0_101] : memref<16x128x128xf32, #tpu.memory_space<vmem>>, vector<1x128x128xf32>
    %212 = vector.shape_cast %211 : vector<1x128x128xf32> to vector<128x128xf32>
    %cst_102 = arith.constant dense<0.000000e+00> : vector<8x128xf32>
    %213 = tpu.matmul %210, %212, %cst_102 {dimension_numbers = #tpu.dot_dimension_numbers<[1], [0], [0], [1], [0, 0, 1, 1], [], []>} : vector<8x128xf32>, vector<128x128xf32>, vector<8x128xf32> -> vector<8x128xf32>
    %214 = arith.addf %208, %213 : vector<8x128xf32>
    %215 = vector.extract_strided_slice %189 {offsets = [1, 0, 0, 0], sizes = [1, 1, 8, 128], strides = [1, 1, 1, 1]} : vector<4x4x8x128xf32> to vector<1x1x8x128xf32>
    %216 = vector.shape_cast %215 : vector<1x1x8x128xf32> to vector<8x128xf32>
    %c4_103 = arith.constant 4 : index
    %c0_104 = arith.constant 0 : index
    %c0_105 = arith.constant 0 : index
    %217 = vector.load %arg7[%c4_103, %c0_104, %c0_105] : memref<16x128x128xf32, #tpu.memory_space<vmem>>, vector<1x128x128xf32>
    %218 = vector.shape_cast %217 : vector<1x128x128xf32> to vector<128x128xf32>
    %cst_106 = arith.constant dense<0.000000e+00> : vector<8x128xf32>
    %219 = tpu.matmul %216, %218, %cst_106 {dimension_numbers = #tpu.dot_dimension_numbers<[1], [0], [0], [1], [0, 0, 1, 1], [], []>} : vector<8x128xf32>, vector<128x128xf32>, vector<8x128xf32> -> vector<8x128xf32>
    %220 = arith.addf %214, %219 : vector<8x128xf32>
    %221 = vector.extract_strided_slice %189 {offsets = [1, 1, 0, 0], sizes = [1, 1, 8, 128], strides = [1, 1, 1, 1]} : vector<4x4x8x128xf32> to vector<1x1x8x128xf32>
    %222 = vector.shape_cast %221 : vector<1x1x8x128xf32> to vector<8x128xf32>
    %c5_107 = arith.constant 5 : index
    %c0_108 = arith.constant 0 : index
    %c0_109 = arith.constant 0 : index
    %223 = vector.load %arg7[%c5_107, %c0_108, %c0_109] : memref<16x128x128xf32, #tpu.memory_space<vmem>>, vector<1x128x128xf32>
    %224 = vector.shape_cast %223 : vector<1x128x128xf32> to vector<128x128xf32>
    %cst_110 = arith.constant dense<0.000000e+00> : vector<8x128xf32>
    %225 = tpu.matmul %222, %224, %cst_110 {dimension_numbers = #tpu.dot_dimension_numbers<[1], [0], [0], [1], [0, 0, 1, 1], [], []>} : vector<8x128xf32>, vector<128x128xf32>, vector<8x128xf32> -> vector<8x128xf32>
    %226 = arith.addf %220, %225 : vector<8x128xf32>
    %227 = vector.extract_strided_slice %189 {offsets = [1, 2, 0, 0], sizes = [1, 1, 8, 128], strides = [1, 1, 1, 1]} : vector<4x4x8x128xf32> to vector<1x1x8x128xf32>
    %228 = vector.shape_cast %227 : vector<1x1x8x128xf32> to vector<8x128xf32>
    %c6_111 = arith.constant 6 : index
    %c0_112 = arith.constant 0 : index
    %c0_113 = arith.constant 0 : index
    %229 = vector.load %arg7[%c6_111, %c0_112, %c0_113] : memref<16x128x128xf32, #tpu.memory_space<vmem>>, vector<1x128x128xf32>
    %230 = vector.shape_cast %229 : vector<1x128x128xf32> to vector<128x128xf32>
    %cst_114 = arith.constant dense<0.000000e+00> : vector<8x128xf32>
    %231 = tpu.matmul %228, %230, %cst_114 {dimension_numbers = #tpu.dot_dimension_numbers<[1], [0], [0], [1], [0, 0, 1, 1], [], []>} : vector<8x128xf32>, vector<128x128xf32>, vector<8x128xf32> -> vector<8x128xf32>
    %232 = arith.addf %226, %231 : vector<8x128xf32>
    %233 = vector.extract_strided_slice %189 {offsets = [1, 3, 0, 0], sizes = [1, 1, 8, 128], strides = [1, 1, 1, 1]} : vector<4x4x8x128xf32> to vector<1x1x8x128xf32>
    %234 = vector.shape_cast %233 : vector<1x1x8x128xf32> to vector<8x128xf32>
    %c7_115 = arith.constant 7 : index
    %c0_116 = arith.constant 0 : index
    %c0_117 = arith.constant 0 : index
    %235 = vector.load %arg7[%c7_115, %c0_116, %c0_117] : memref<16x128x128xf32, #tpu.memory_space<vmem>>, vector<1x128x128xf32>
    %236 = vector.shape_cast %235 : vector<1x128x128xf32> to vector<128x128xf32>
    %cst_118 = arith.constant dense<0.000000e+00> : vector<8x128xf32>
    %237 = tpu.matmul %234, %236, %cst_118 {dimension_numbers = #tpu.dot_dimension_numbers<[1], [0], [0], [1], [0, 0, 1, 1], [], []>} : vector<8x128xf32>, vector<128x128xf32>, vector<8x128xf32> -> vector<8x128xf32>
    %238 = arith.addf %232, %237 : vector<8x128xf32>
    %239 = vector.extract_strided_slice %189 {offsets = [2, 0, 0, 0], sizes = [1, 1, 8, 128], strides = [1, 1, 1, 1]} : vector<4x4x8x128xf32> to vector<1x1x8x128xf32>
    %240 = vector.shape_cast %239 : vector<1x1x8x128xf32> to vector<8x128xf32>
    %c8_119 = arith.constant 8 : index
    %c0_120 = arith.constant 0 : index
    %c0_121 = arith.constant 0 : index
    %241 = vector.load %arg7[%c8_119, %c0_120, %c0_121] : memref<16x128x128xf32, #tpu.memory_space<vmem>>, vector<1x128x128xf32>
    %242 = vector.shape_cast %241 : vector<1x128x128xf32> to vector<128x128xf32>
    %cst_122 = arith.constant dense<0.000000e+00> : vector<8x128xf32>
    %243 = tpu.matmul %240, %242, %cst_122 {dimension_numbers = #tpu.dot_dimension_numbers<[1], [0], [0], [1], [0, 0, 1, 1], [], []>} : vector<8x128xf32>, vector<128x128xf32>, vector<8x128xf32> -> vector<8x128xf32>
    %244 = arith.addf %238, %243 : vector<8x128xf32>
    %245 = vector.extract_strided_slice %189 {offsets = [2, 1, 0, 0], sizes = [1, 1, 8, 128], strides = [1, 1, 1, 1]} : vector<4x4x8x128xf32> to vector<1x1x8x128xf32>
    %246 = vector.shape_cast %245 : vector<1x1x8x128xf32> to vector<8x128xf32>
    %c9_123 = arith.constant 9 : index
    %c0_124 = arith.constant 0 : index
    %c0_125 = arith.constant 0 : index
    %247 = vector.load %arg7[%c9_123, %c0_124, %c0_125] : memref<16x128x128xf32, #tpu.memory_space<vmem>>, vector<1x128x128xf32>
    %248 = vector.shape_cast %247 : vector<1x128x128xf32> to vector<128x128xf32>
    %cst_126 = arith.constant dense<0.000000e+00> : vector<8x128xf32>
    %249 = tpu.matmul %246, %248, %cst_126 {dimension_numbers = #tpu.dot_dimension_numbers<[1], [0], [0], [1], [0, 0, 1, 1], [], []>} : vector<8x128xf32>, vector<128x128xf32>, vector<8x128xf32> -> vector<8x128xf32>
    %250 = arith.addf %244, %249 : vector<8x128xf32>
    %251 = vector.extract_strided_slice %189 {offsets = [2, 2, 0, 0], sizes = [1, 1, 8, 128], strides = [1, 1, 1, 1]} : vector<4x4x8x128xf32> to vector<1x1x8x128xf32>
    %252 = vector.shape_cast %251 : vector<1x1x8x128xf32> to vector<8x128xf32>
    %c10_127 = arith.constant 10 : index
    %c0_128 = arith.constant 0 : index
    %c0_129 = arith.constant 0 : index
    %253 = vector.load %arg7[%c10_127, %c0_128, %c0_129] : memref<16x128x128xf32, #tpu.memory_space<vmem>>, vector<1x128x128xf32>
    %254 = vector.shape_cast %253 : vector<1x128x128xf32> to vector<128x128xf32>
    %cst_130 = arith.constant dense<0.000000e+00> : vector<8x128xf32>
    %255 = tpu.matmul %252, %254, %cst_130 {dimension_numbers = #tpu.dot_dimension_numbers<[1], [0], [0], [1], [0, 0, 1, 1], [], []>} : vector<8x128xf32>, vector<128x128xf32>, vector<8x128xf32> -> vector<8x128xf32>
    %256 = arith.addf %250, %255 : vector<8x128xf32>
    %257 = vector.extract_strided_slice %189 {offsets = [2, 3, 0, 0], sizes = [1, 1, 8, 128], strides = [1, 1, 1, 1]} : vector<4x4x8x128xf32> to vector<1x1x8x128xf32>
    %258 = vector.shape_cast %257 : vector<1x1x8x128xf32> to vector<8x128xf32>
    %c11_131 = arith.constant 11 : index
    %c0_132 = arith.constant 0 : index
    %c0_133 = arith.constant 0 : index
    %259 = vector.load %arg7[%c11_131, %c0_132, %c0_133] : memref<16x128x128xf32, #tpu.memory_space<vmem>>, vector<1x128x128xf32>
    %260 = vector.shape_cast %259 : vector<1x128x128xf32> to vector<128x128xf32>
    %cst_134 = arith.constant dense<0.000000e+00> : vector<8x128xf32>
    %261 = tpu.matmul %258, %260, %cst_134 {dimension_numbers = #tpu.dot_dimension_numbers<[1], [0], [0], [1], [0, 0, 1, 1], [], []>} : vector<8x128xf32>, vector<128x128xf32>, vector<8x128xf32> -> vector<8x128xf32>
    %262 = arith.addf %256, %261 : vector<8x128xf32>
    %263 = vector.extract_strided_slice %189 {offsets = [3, 0, 0, 0], sizes = [1, 1, 8, 128], strides = [1, 1, 1, 1]} : vector<4x4x8x128xf32> to vector<1x1x8x128xf32>
    %264 = vector.shape_cast %263 : vector<1x1x8x128xf32> to vector<8x128xf32>
    %c12_135 = arith.constant 12 : index
    %c0_136 = arith.constant 0 : index
    %c0_137 = arith.constant 0 : index
    %265 = vector.load %arg7[%c12_135, %c0_136, %c0_137] : memref<16x128x128xf32, #tpu.memory_space<vmem>>, vector<1x128x128xf32>
    %266 = vector.shape_cast %265 : vector<1x128x128xf32> to vector<128x128xf32>
    %cst_138 = arith.constant dense<0.000000e+00> : vector<8x128xf32>
    %267 = tpu.matmul %264, %266, %cst_138 {dimension_numbers = #tpu.dot_dimension_numbers<[1], [0], [0], [1], [0, 0, 1, 1], [], []>} : vector<8x128xf32>, vector<128x128xf32>, vector<8x128xf32> -> vector<8x128xf32>
    %268 = arith.addf %262, %267 : vector<8x128xf32>
    %269 = vector.extract_strided_slice %189 {offsets = [3, 1, 0, 0], sizes = [1, 1, 8, 128], strides = [1, 1, 1, 1]} : vector<4x4x8x128xf32> to vector<1x1x8x128xf32>
    %270 = vector.shape_cast %269 : vector<1x1x8x128xf32> to vector<8x128xf32>
    %c13_139 = arith.constant 13 : index
    %c0_140 = arith.constant 0 : index
    %c0_141 = arith.constant 0 : index
    %271 = vector.load %arg7[%c13_139, %c0_140, %c0_141] : memref<16x128x128xf32, #tpu.memory_space<vmem>>, vector<1x128x128xf32>
    %272 = vector.shape_cast %271 : vector<1x128x128xf32> to vector<128x128xf32>
    %cst_142 = arith.constant dense<0.000000e+00> : vector<8x128xf32>
    %273 = tpu.matmul %270, %272, %cst_142 {dimension_numbers = #tpu.dot_dimension_numbers<[1], [0], [0], [1], [0, 0, 1, 1], [], []>} : vector<8x128xf32>, vector<128x128xf32>, vector<8x128xf32> -> vector<8x128xf32>
    %274 = arith.addf %268, %273 : vector<8x128xf32>
    %275 = vector.extract_strided_slice %189 {offsets = [3, 2, 0, 0], sizes = [1, 1, 8, 128], strides = [1, 1, 1, 1]} : vector<4x4x8x128xf32> to vector<1x1x8x128xf32>
    %276 = vector.shape_cast %275 : vector<1x1x8x128xf32> to vector<8x128xf32>
    %c14_143 = arith.constant 14 : index
    %c0_144 = arith.constant 0 : index
    %c0_145 = arith.constant 0 : index
    %277 = vector.load %arg7[%c14_143, %c0_144, %c0_145] : memref<16x128x128xf32, #tpu.memory_space<vmem>>, vector<1x128x128xf32>
    %278 = vector.shape_cast %277 : vector<1x128x128xf32> to vector<128x128xf32>
    %cst_146 = arith.constant dense<0.000000e+00> : vector<8x128xf32>
    %279 = tpu.matmul %276, %278, %cst_146 {dimension_numbers = #tpu.dot_dimension_numbers<[1], [0], [0], [1], [0, 0, 1, 1], [], []>} : vector<8x128xf32>, vector<128x128xf32>, vector<8x128xf32> -> vector<8x128xf32>
    %280 = arith.addf %274, %279 : vector<8x128xf32>
    %281 = vector.extract_strided_slice %189 {offsets = [3, 3, 0, 0], sizes = [1, 1, 8, 128], strides = [1, 1, 1, 1]} : vector<4x4x8x128xf32> to vector<1x1x8x128xf32>
    %282 = vector.shape_cast %281 : vector<1x1x8x128xf32> to vector<8x128xf32>
    %c15_147 = arith.constant 15 : index
    %c0_148 = arith.constant 0 : index
    %c0_149 = arith.constant 0 : index
    %283 = vector.load %arg7[%c15_147, %c0_148, %c0_149] : memref<16x128x128xf32, #tpu.memory_space<vmem>>, vector<1x128x128xf32>
    %284 = vector.shape_cast %283 : vector<1x128x128xf32> to vector<128x128xf32>
    %cst_150 = arith.constant dense<0.000000e+00> : vector<8x128xf32>
    %285 = tpu.matmul %282, %284, %cst_150 {dimension_numbers = #tpu.dot_dimension_numbers<[1], [0], [0], [1], [0, 0, 1, 1], [], []>} : vector<8x128xf32>, vector<128x128xf32>, vector<8x128xf32> -> vector<8x128xf32>
    %286 = arith.addf %280, %285 : vector<8x128xf32>
    %c0_151 = arith.constant 0 : index
    %c0_152 = arith.constant 0 : index
    %287 = vector.load %arg8[%c0_151, %c0_152] : memref<1x128xf32, #tpu.memory_space<vmem>>, vector<1x128xf32>
    %288 = vector.broadcast %287 : vector<1x128xf32> to vector<8x128xf32>
    %289 = arith.addf %286, %288 : vector<8x128xf32>
    %cst_153 = arith.constant 0.000000e+00 : f32
    %290 = vector.broadcast %cst_153 : f32 to vector<8x128xf32>
    %291 = arith.maximumf %289, %290 : vector<8x128xf32>
    %c0_154 = arith.constant 0 : index
    %c0_155 = arith.constant 0 : index
    %292 = vector.load %arg9[%c0_154, %c0_155] : memref<128x128xf32, #tpu.memory_space<vmem>>, vector<128x128xf32>
    %cst_156 = arith.constant dense<0.000000e+00> : vector<8x128xf32>
    %293 = tpu.matmul %291, %292, %cst_156 {dimension_numbers = #tpu.dot_dimension_numbers<[1], [0], [0], [1], [0, 0, 1, 1], [], []>} : vector<8x128xf32>, vector<128x128xf32>, vector<8x128xf32> -> vector<8x128xf32>
    %c0_157 = arith.constant 0 : index
    %c0_158 = arith.constant 0 : index
    %294 = vector.load %arg10[%c0_157, %c0_158] : memref<1x128xf32, #tpu.memory_space<vmem>>, vector<1x128xf32>
    %295 = vector.broadcast %294 : vector<1x128xf32> to vector<8x128xf32>
    %296 = arith.addf %293, %295 : vector<8x128xf32>
    %cst_159 = arith.constant 0.000000e+00 : f32
    %297 = vector.broadcast %cst_159 : f32 to vector<8x128xf32>
    %298 = arith.maximumf %296, %297 : vector<8x128xf32>
    %c0_160 = arith.constant 0 : index
    %c0_161 = arith.constant 0 : index
    %299 = vector.load %arg11[%c0_160, %c0_161] : memref<128x128xf32, #tpu.memory_space<vmem>>, vector<128x128xf32>
    %cst_162 = arith.constant dense<0.000000e+00> : vector<8x128xf32>
    %300 = tpu.matmul %298, %299, %cst_162 {dimension_numbers = #tpu.dot_dimension_numbers<[1], [0], [0], [1], [0, 0, 1, 1], [], []>} : vector<8x128xf32>, vector<128x128xf32>, vector<8x128xf32> -> vector<8x128xf32>
    %c0_163 = arith.constant 0 : index
    %c0_164 = arith.constant 0 : index
    %301 = vector.load %arg12[%c0_163, %c0_164] : memref<1x128xf32, #tpu.memory_space<vmem>>, vector<1x128xf32>
    %302 = vector.broadcast %301 : vector<1x128xf32> to vector<8x128xf32>
    %303 = arith.addf %300, %302 : vector<8x128xf32>
    %304 = tpu.iota {dimensions = array<i32: 1>} : vector<8x128xi32>
    %c10_i32 = arith.constant 10 : i32
    %305 = vector.broadcast %c10_i32 : i32 to vector<8x128xi32>
    %306 = arith.cmpi slt, %304, %305 : vector<8x128xi32>
    %cst_165 = arith.constant -1.000000e+30 : f32
    %307 = vector.broadcast %cst_165 : f32 to vector<8x128xf32>
    %308 = arith.select %306, %303, %307 : vector<8x128xi1>, vector<8x128xf32>
    %cst_166 = arith.constant dense<0xFF800000> : vector<8xf32>
    %309 = vector.multi_reduction <maximumf>, %308, %cst_166 [1] : vector<8x128xf32> to vector<8xf32>
    %310 = vector.shape_cast %309 : vector<8xf32> to vector<8x1xf32>
    %311 = vector.broadcast %310 : vector<8x1xf32> to vector<8x128xf32>
    %312 = arith.subf %308, %311 : vector<8x128xf32>
    %313 = math.exp %312 : vector<8x128xf32>
    %cst_167 = arith.constant dense<0.000000e+00> : vector<8xf32>
    %314 = vector.multi_reduction <add>, %313, %cst_167 [1] : vector<8x128xf32> to vector<8xf32>
    %315 = vector.shape_cast %314 : vector<8xf32> to vector<8x1xf32>
    %316 = math.log %315 : vector<8x1xf32>
    %317 = arith.addf %310, %316 : vector<8x1xf32>
    %c0_168 = arith.constant 0 : index
    %c0_169 = arith.constant 0 : index
    %318 = vector.load %arg2[%c0_168, %c0_169] : memref<8x1xi32, #tpu.memory_space<vmem>>, vector<8x1xi32>
    %319 = vector.broadcast %318 : vector<8x1xi32> to vector<8x128xi32>
    %320 = arith.cmpi eq, %304, %319 : vector<8x128xi32>
    %cst_170 = arith.constant 0.000000e+00 : f32
    %321 = vector.broadcast %cst_170 : f32 to vector<8x128xf32>
    %322 = arith.select %320, %303, %321 : vector<8x128xi1>, vector<8x128xf32>
    %cst_171 = arith.constant dense<0.000000e+00> : vector<8xf32>
    %323 = vector.multi_reduction <add>, %322, %cst_171 [1] : vector<8x128xf32> to vector<8xf32>
    %324 = vector.shape_cast %323 : vector<8xf32> to vector<8x1xf32>
    %c0_i32 = arith.constant 0 : i32
    %325 = vector.broadcast %c0_i32 : i32 to vector<8x1xi32>
    %326 = arith.cmpi sge, %318, %325 : vector<8x1xi32>
    %327 = arith.subf %317, %324 : vector<8x1xf32>
    %cst_172 = arith.constant 0.000000e+00 : f32
    %328 = vector.broadcast %cst_172 : f32 to vector<8x1xf32>
    %329 = arith.select %326, %327, %328 : vector<8x1xi1>, vector<8x1xf32>
    %330 = vector.shape_cast %329 : vector<8x1xf32> to vector<8x1xf32>
    %331 = vector.broadcast %330 : vector<8x1xf32> to vector<8x128xf32>
    %c0_173 = arith.constant 0 : index
    %c0_174 = arith.constant 0 : index
    %332 = vector.load %arg13[%c0_173, %c0_174] : memref<8x128xf32, #tpu.memory_space<vmem>>, vector<8x128xf32>
    tpu.vector_store %arg13[%c0_173, %c0_174], %331 {strides = array<i32>} : memref<8x128xf32, #tpu.memory_space<vmem>>, vector<8x128xf32>,
    return
  }
  func.func @transform_0(%arg0: i32) -> (i32, i32) {
    %c0_i32 = arith.constant 0 : i32
    %c0_i32_0 = arith.constant 0 : i32
    return %arg0, %c0_i32 : i32, i32
  }
  func.func @transform_1(%arg0: i32) -> (i32, i32) {
    %c0_i32 = arith.constant 0 : i32
    %c0_i32_0 = arith.constant 0 : i32
    return %arg0, %c0_i32 : i32, i32
  }
  func.func @transform_2(%arg0: i32) -> (i32, i32) {
    %c0_i32 = arith.constant 0 : i32
    %c0_i32_0 = arith.constant 0 : i32
    %c0_i32_1 = arith.constant 0 : i32
    return %c0_i32, %c0_i32_0 : i32, i32
  }
  func.func @transform_3(%arg0: i32) -> (i32, i32) {
    %c0_i32 = arith.constant 0 : i32
    %c0_i32_0 = arith.constant 0 : i32
    %c0_i32_1 = arith.constant 0 : i32
    return %c0_i32, %c0_i32_0 : i32, i32
  }
  func.func @transform_4(%arg0: i32) -> (i32, i32, i32) {
    %c0_i32 = arith.constant 0 : i32
    %c0_i32_0 = arith.constant 0 : i32
    %c0_i32_1 = arith.constant 0 : i32
    %c0_i32_2 = arith.constant 0 : i32
    return %c0_i32, %c0_i32_0, %c0_i32_1 : i32, i32, i32
  }
  func.func @transform_5(%arg0: i32) -> (i32, i32) {
    %c0_i32 = arith.constant 0 : i32
    %c0_i32_0 = arith.constant 0 : i32
    %c0_i32_1 = arith.constant 0 : i32
    return %c0_i32, %c0_i32_0 : i32, i32
  }
  func.func @transform_6(%arg0: i32) -> (i32, i32, i32) {
    %c0_i32 = arith.constant 0 : i32
    %c0_i32_0 = arith.constant 0 : i32
    %c0_i32_1 = arith.constant 0 : i32
    %c0_i32_2 = arith.constant 0 : i32
    return %c0_i32, %c0_i32_0, %c0_i32_1 : i32, i32, i32
  }
  func.func @transform_7(%arg0: i32) -> (i32, i32) {
    %c0_i32 = arith.constant 0 : i32
    %c0_i32_0 = arith.constant 0 : i32
    %c0_i32_1 = arith.constant 0 : i32
    return %c0_i32, %c0_i32_0 : i32, i32
  }
  func.func @transform_8(%arg0: i32) -> (i32, i32) {
    %c0_i32 = arith.constant 0 : i32
    %c0_i32_0 = arith.constant 0 : i32
    %c0_i32_1 = arith.constant 0 : i32
    return %c0_i32, %c0_i32_0 : i32, i32
  }
  func.func @transform_9(%arg0: i32) -> (i32, i32) {
    %c0_i32 = arith.constant 0 : i32
    %c0_i32_0 = arith.constant 0 : i32
    %c0_i32_1 = arith.constant 0 : i32
    return %c0_i32, %c0_i32_0 : i32, i32
  }
  func.func @transform_10(%arg0: i32) -> (i32, i32) {
    %c0_i32 = arith.constant 0 : i32
    %c0_i32_0 = arith.constant 0 : i32
    %c0_i32_1 = arith.constant 0 : i32
    return %c0_i32, %c0_i32_0 : i32, i32
  }
  func.func @transform_11(%arg0: i32) -> (i32, i32) {
    %c0_i32 = arith.constant 0 : i32
    %c0_i32_0 = arith.constant 0 : i32
    %c0_i32_1 = arith.constant 0 : i32
    return %c0_i32, %c0_i32_0 : i32, i32
  }
  func.func @transform_12(%arg0: i32) -> (i32, i32) {
    %c0_i32 = arith.constant 0 : i32
    %c0_i32_0 = arith.constant 0 : i32
    return %arg0, %c0_i32 : i32, i32
  }
}

</mosaic_0001>

<llo_original>
// kernel: lenet_forward.1
$region0: #{lenet_forward.1}
  #allocation0 [shape = 'u32[]', space=smem, size = 0x4, offset = 0x4, fixed_abs, tag = 'smem constant byte address 0x4 - core index']
  #allocation1 [shape = 'u32[72,128]{1,0:T(1,128)}', space=vmem, size = 0x9000, scoped, tag = 'internal scratch']
  %s0 = inlined_call_operand.vmem [shape: f32[4608,32], index: 0, kind: input, shape index: {}]
  %s1 = inlined_call_operand.vmem [shape: s32[8,1], index: 1, kind: input, shape index: {}]
  %s2 = inlined_call_operand.vmem [shape: f32[32,128], index: 2, kind: input, shape index: {}]
  %s3 = inlined_call_operand.vmem [shape: f32[1,128], index: 3, kind: input, shape index: {}]
  %s4 = inlined_call_operand.vmem [shape: f32[25,128,128], index: 4, kind: input, shape index: {}]
  %s5 = inlined_call_operand.vmem [shape: f32[1,128], index: 5, kind: input, shape index: {}]
  %s6 = inlined_call_operand.vmem [shape: f32[16,128,128], index: 6, kind: input, shape index: {}]
  %s7 = inlined_call_operand.vmem [shape: f32[1,128], index: 7, kind: input, shape index: {}]
  %s8 = inlined_call_operand.vmem [shape: f32[128,128], index: 8, kind: input, shape index: {}]
  %s9 = inlined_call_operand.vmem [shape: f32[1,128], index: 9, kind: input, shape index: {}]
  %s10 = inlined_call_operand.vmem [shape: f32[128,128], index: 10, kind: input, shape index: {}]
  %s11 = inlined_call_operand.vmem [shape: f32[1,128], index: 11, kind: input, shape index: {}]
  %s12 = inlined_call_operand.vmem [shape: f32[8,128], index: 12, kind: output, shape index: {}]
  %s13 = sld [smem:[#allocation0]]
  $region58: #{lenet_forward.1} parent=0
    _
  %s15 = ssub.s32 1, %s13
  %s16 = scalar_select 0, %s15, %s13
  // Predicated region
  $region2: #{lenet_forward.1} parent=0 // pred_check
    _
  $region3: #{lenet_forward.1} parent=0 // pred_check_branch
    %18 = sbr.rel (0) target = $region5
  $region4: #{lenet_forward.1} parent=0 // pred_region
    _
  $region5: #{lenet_forward.1} parent=0 // pred_fallthru
    _
  // Predicated region
  $region6: #{lenet_forward.1} parent=0 // pred_check
    _
  $region7: #{lenet_forward.1} parent=0 // pred_check_branch
    %20 = sbr.rel (0) target = $region9
  $region8: #{lenet_forward.1} parent=0 // pred_region
    _
  $region9: #{lenet_forward.1} parent=0 // pred_fallthru
    _
  // Predicated region
  $region10: #{lenet_forward.1} parent=0 // pred_check
    _
  $region11: #{lenet_forward.1} parent=0 // pred_check_branch
    %22 = sbr.rel (0) target = $region13
  $region12: #{lenet_forward.1} parent=0 // pred_region
    _
  $region13: #{lenet_forward.1} parent=0 // pred_fallthru
    _
  // Predicated region
  $region14: #{lenet_forward.1} parent=0 // pred_check
    _
  $region15: #{lenet_forward.1} parent=0 // pred_check_branch
    %24 = sbr.rel (0) target = $region17
  $region16: #{lenet_forward.1} parent=0 // pred_region
    _
  $region17: #{lenet_forward.1} parent=0 // pred_fallthru
    _
  // Predicated region
  $region18: #{lenet_forward.1} parent=0 // pred_check
    _
  $region19: #{lenet_forward.1} parent=0 // pred_check_branch
    %26 = sbr.rel (0) target = $region21
  $region20: #{lenet_forward.1} parent=0 // pred_region
    _
  $region21: #{lenet_forward.1} parent=0 // pred_fallthru
    _
  // Predicated region
  $region22: #{lenet_forward.1} parent=0 // pred_check
    _
  $region23: #{lenet_forward.1} parent=0 // pred_check_branch
    %28 = sbr.rel (0) target = $region25
  $region24: #{lenet_forward.1} parent=0 // pred_region
    _
  $region25: #{lenet_forward.1} parent=0 // pred_fallthru
    _
  // Predicated region
  $region26: #{lenet_forward.1} parent=0 // pred_check
    _
  $region27: #{lenet_forward.1} parent=0 // pred_check_branch
    %30 = sbr.rel (0) target = $region29
  $region28: #{lenet_forward.1} parent=0 // pred_region
    _
  $region29: #{lenet_forward.1} parent=0 // pred_fallthru
    _
  // Predicated region
  $region30: #{lenet_forward.1} parent=0 // pred_check
    _
  $region31: #{lenet_forward.1} parent=0 // pred_check_branch
    %32 = sbr.rel (0) target = $region33
  $region32: #{lenet_forward.1} parent=0 // pred_region
    _
  $region33: #{lenet_forward.1} parent=0 // pred_fallthru
    _
  // Predicated region
  $region34: #{lenet_forward.1} parent=0 // pred_check
    _
  $region35: #{lenet_forward.1} parent=0 // pred_check_branch
    %34 = sbr.rel (0) target = $region37
  $region36: #{lenet_forward.1} parent=0 // pred_region
    _
  $region37: #{lenet_forward.1} parent=0 // pred_fallthru
    _
  // Predicated region
  $region38: #{lenet_forward.1} parent=0 // pred_check
    _
  $region39: #{lenet_forward.1} parent=0 // pred_check_branch
    %36 = sbr.rel (0) target = $region41
  $region40: #{lenet_forward.1} parent=0 // pred_region
    _
  $region41: #{lenet_forward.1} parent=0 // pred_fallthru
    _
  // Predicated region
  $region42: #{lenet_forward.1} parent=0 // pred_check
    _
  $region43: #{lenet_forward.1} parent=0 // pred_check_branch
    %38 = sbr.rel (0) target = $region45
  $region44: #{lenet_forward.1} parent=0 // pred_region
    _
  $region45: #{lenet_forward.1} parent=0 // pred_fallthru
    _
  // Predicated region
  $region46: #{lenet_forward.1} parent=0 // pred_check
    _
  $region47: #{lenet_forward.1} parent=0 // pred_check_branch
    %40 = sbr.rel (0) target = $region49
  $region48: #{lenet_forward.1} parent=0 // pred_region
    _
  $region49: #{lenet_forward.1} parent=0 // pred_fallthru
    _
  %v41 = vld [vmem:[%s0] sm:$0xff]
  %v42 = vld [vmem:[%s0 + $0x8] sm:$0xff]
  %v43 = vld [vmem:[%s0 + $0x10] sm:$0xff]
  %v44 = vld [vmem:[%s0 + $0x18] sm:$0xff]
  %v45 = vld [vmem:[%s0 + $0x20] sm:$0xff]
  %v46 = vld [vmem:[%s0 + $0x28] sm:$0xff]
  %v47 = vld [vmem:[%s0 + $0x30] sm:$0xff]
  %v48 = vld [vmem:[%s0 + $0x38] sm:$0xff]
  %v49 = vld [vmem:[%s0 + $0x40] sm:$0xff]
  %v50 = vld [vmem:[%s0 + $0x48] sm:$0xff]
  %v51 = vld [vmem:[%s0 + $0x50] sm:$0xff]
  %v52 = vld [vmem:[%s0 + $0x58] sm:$0xff]
  %v53 = vld [vmem:[%s0 + $0x60] sm:$0xff]
  %v54 = vld [vmem:[%s0 + $0x68] sm:$0xff]
  %v55 = vld [vmem:[%s0 + $0x70] sm:$0xff]
  %v56 = vld [vmem:[%s0 + $0x78] sm:$0xff]
  %v57 = vld [vmem:[%s0 + $0x80] sm:$0xff]
  %v58 = vld [vmem:[%s0 + $0x88] sm:$0xff]
  %v59 = vld [vmem:[%s0 + $0x90] sm:$0xff]
  %v60 = vld [vmem:[%s0 + $0x98] sm:$0xff]
  %v61 = vld [vmem:[%s0 + $0xa0] sm:$0xff]
  %v62 = vld [vmem:[%s0 + $0xa8] sm:$0xff]
  %v63 = vld [vmem:[%s0 + $0xb0] sm:$0xff]
  %v64 = vld [vmem:[%s0 + $0xb8] sm:$0xff]
  %v65 = vld [vmem:[%s0 + $0xc0] sm:$0xff]
  %v66 = vld [vmem:[%s0 + $0xc8] sm:$0xff]
  %v67 = vld [vmem:[%s0 + $0xd0] sm:$0xff]
  %v68 = vld [vmem:[%s0 + $0xd8] sm:$0xff]
  %v69 = vld [vmem:[%s0 + $0xe0] sm:$0xff]
  %v70 = vld [vmem:[%s0 + $0xe8] sm:$0xff]
  %v71 = vld [vmem:[%s0 + $0xf0] sm:$0xff]
  %v72 = vld [vmem:[%s0 + $0xf8] sm:$0xff]
  %v73 = vld [vmem:[%s0 + $0x100] sm:$0xff]
  %v74 = vld [vmem:[%s0 + $0x108] sm:$0xff]
  %v75 = vld [vmem:[%s0 + $0x110] sm:$0xff]
  %v76 = vld [vmem:[%s0 + $0x118] sm:$0xff]
  %v77 = vld [vmem:[%s0 + $0x120] sm:$0xff]
  %v78 = vld [vmem:[%s0 + $0x128] sm:$0xff]
  %v79 = vld [vmem:[%s0 + $0x130] sm:$0xff]
  %v80 = vld [vmem:[%s0 + $0x138] sm:$0xff]
  %v81 = vld [vmem:[%s0 + $0x140] sm:$0xff]
  %v82 = vld [vmem:[%s0 + $0x148] sm:$0xff]
  %v83 = vld [vmem:[%s0 + $0x150] sm:$0xff]
  %v84 = vld [vmem:[%s0 + $0x158] sm:$0xff]
  %v85 = vld [vmem:[%s0 + $0x160] sm:$0xff]
  %v86 = vld [vmem:[%s0 + $0x168] sm:$0xff]
  %v87 = vld [vmem:[%s0 + $0x170] sm:$0xff]
  %v88 = vld [vmem:[%s0 + $0x178] sm:$0xff]
  %v89 = vld [vmem:[%s0 + $0x180] sm:$0xff]
  %v90 = vld [vmem:[%s0 + $0x188] sm:$0xff]
  %v91 = vld [vmem:[%s0 + $0x190] sm:$0xff]
  %v92 = vld [vmem:[%s0 + $0x198] sm:$0xff]
  %v93 = vld [vmem:[%s0 + $0x1a0] sm:$0xff]
  %v94 = vld [vmem:[%s0 + $0x1a8] sm:$0xff]
  %v95 = vld [vmem:[%s0 + $0x1b0] sm:$0xff]
  %v96 = vld [vmem:[%s0 + $0x1b8] sm:$0xff]
  %v97 = vld [vmem:[%s0 + $0x1c0] sm:$0xff]
  %v98 = vld [vmem:[%s0 + $0x1c8] sm:$0xff]
  %v99 = vld [vmem:[%s0 + $0x1d0] sm:$0xff]
  %v100 = vld [vmem:[%s0 + $0x1d8] sm:$0xff]
  %v101 = vld [vmem:[%s0 + $0x1e0] sm:$0xff]
  %v102 = vld [vmem:[%s0 + $0x1e8] sm:$0xff]
  %v103 = vld [vmem:[%s0 + $0x1f0] sm:$0xff]
  %v104 = vld [vmem:[%s0 + $0x1f8] sm:$0xff]
  %v105 = vld [vmem:[%s0 + $0x200] sm:$0xff]
  %v106 = vld [vmem:[%s0 + $0x208] sm:$0xff]
  %v107 = vld [vmem:[%s0 + $0x210] sm:$0xff]
  %v108 = vld [vmem:[%s0 + $0x218] sm:$0xff]
  %v109 = vld [vmem:[%s0 + $0x220] sm:$0xff]
  %v110 = vld [vmem:[%s0 + $0x228] sm:$0xff]
  %v111 = vld [vmem:[%s0 + $0x230] sm:$0xff]
  %v112 = vld [vmem:[%s0 + $0x238] sm:$0xff]
  %v113 = vld [vmem:[%s0 + $0x240] sm:$0xff]
  %v114 = vld [vmem:[%s0 + $0x248] sm:$0xff]
  %v115 = vld [vmem:[%s0 + $0x250] sm:$0xff]
  %v116 = vld [vmem:[%s0 + $0x258] sm:$0xff]
  %v117 = vld [vmem:[%s0 + $0x260] sm:$0xff]
  %v118 = vld [vmem:[%s0 + $0x268] sm:$0xff]
  %v119 = vld [vmem:[%s0 + $0x270] sm:$0xff]
  %v120 = vld [vmem:[%s0 + $0x278] sm:$0xff]
  %v121 = vld [vmem:[%s0 + $0x280] sm:$0xff]
  %v122 = vld [vmem:[%s0 + $0x288] sm:$0xff]
  %v123 = vld [vmem:[%s0 + $0x290] sm:$0xff]
  %v124 = vld [vmem:[%s0 + $0x298] sm:$0xff]
  %v125 = vld [vmem:[%s0 + $0x2a0] sm:$0xff]
  %v126 = vld [vmem:[%s0 + $0x2a8] sm:$0xff]
  %v127 = vld [vmem:[%s0 + $0x2b0] sm:$0xff]
  %v128 = vld [vmem:[%s0 + $0x2b8] sm:$0xff]
  %v129 = vld [vmem:[%s0 + $0x2c0] sm:$0xff]
  %v130 = vld [vmem:[%s0 + $0x2c8] sm:$0xff]
  %v131 = vld [vmem:[%s0 + $0x2d0] sm:$0xff]
  %v132 = vld [vmem:[%s0 + $0x2d8] sm:$0xff]
  %v133 = vld [vmem:[%s0 + $0x2e0] sm:$0xff]
  %v134 = vld [vmem:[%s0 + $0x2e8] sm:$0xff]
  %v135 = vld [vmem:[%s0 + $0x2f0] sm:$0xff]
  %v136 = vld [vmem:[%s0 + $0x2f8] sm:$0xff]
  %v137 = vld [vmem:[%s0 + $0x300] sm:$0xff]
  %v138 = vld [vmem:[%s0 + $0x308] sm:$0xff]
  %v139 = vld [vmem:[%s0 + $0x310] sm:$0xff]
  %v140 = vld [vmem:[%s0 + $0x318] sm:$0xff]
  %v141 = vld [vmem:[%s0 + $0x320] sm:$0xff]
  %v142 = vld [vmem:[%s0 + $0x328] sm:$0xff]
  %v143 = vld [vmem:[%s0 + $0x330] sm:$0xff]
  %v144 = vld [vmem:[%s0 + $0x338] sm:$0xff]
  %v145 = vld [vmem:[%s0 + $0x340] sm:$0xff]
  %v146 = vld [vmem:[%s0 + $0x348] sm:$0xff]
  %v147 = vld [vmem:[%s0 + $0x350] sm:$0xff]
  %v148 = vld [vmem:[%s0 + $0x358] sm:$0xff]
  %v149 = vld [vmem:[%s0 + $0x360] sm:$0xff]
  %v150 = vld [vmem:[%s0 + $0x368] sm:$0xff]
  %v151 = vld [vmem:[%s0 + $0x370] sm:$0xff]
  %v152 = vld [vmem:[%s0 + $0x378] sm:$0xff]
  %v153 = vld [vmem:[%s0 + $0x380] sm:$0xff]
  %v154 = vld [vmem:[%s0 + $0x388] sm:$0xff]
  %v155 = vld [vmem:[%s0 + $0x390] sm:$0xff]
  %v156 = vld [vmem:[%s0 + $0x398] sm:$0xff]
  %v157 = vld [vmem:[%s0 + $0x3a0] sm:$0xff]
  %v158 = vld [vmem:[%s0 + $0x3a8] sm:$0xff]
  %v159 = vld [vmem:[%s0 + $0x3b0] sm:$0xff]
  %v160 = vld [vmem:[%s0 + $0x3b8] sm:$0xff]
  %v161 = vld [vmem:[%s0 + $0x3c0] sm:$0xff]
  %v162 = vld [vmem:[%s0 + $0x3c8] sm:$0xff]
  %v163 = vld [vmem:[%s0 + $0x3d0] sm:$0xff]
  %v164 = vld [vmem:[%s0 + $0x3d8] sm:$0xff]
  %v165 = vld [vmem:[%s0 + $0x3e0] sm:$0xff]
  %v166 = vld [vmem:[%s0 + $0x3e8] sm:$0xff]
  %v167 = vld [vmem:[%s0 + $0x3f0] sm:$0xff]
  %v168 = vld [vmem:[%s0 + $0x3f8] sm:$0xff]
  %v169 = vld [vmem:[%s0 + $0x400] sm:$0xff]
  %v170 = vld [vmem:[%s0 + $0x408] sm:$0xff]
  %v171 = vld [vmem:[%s0 + $0x410] sm:$0xff]
  %v172 = vld [vmem:[%s0 + $0x418] sm:$0xff]
  %v173 = vld [vmem:[%s0 + $0x420] sm:$0xff]
  %v174 = vld [vmem:[%s0 + $0x428] sm:$0xff]
  %v175 = vld [vmem:[%s0 + $0x430] sm:$0xff]
  %v176 = vld [vmem:[%s0 + $0x438] sm:$0xff]
  %v177 = vld [vmem:[%s0 + $0x440] sm:$0xff]
  %v178 = vld [vmem:[%s0 + $0x448] sm:$0xff]
  %v179 = vld [vmem:[%s0 + $0x450] sm:$0xff]
  %v180 = vld [vmem:[%s0 + $0x458] sm:$0xff]
  %v181 = vld [vmem:[%s0 + $0x460] sm:$0xff]
  %v182 = vld [vmem:[%s0 + $0x468] sm:$0xff]
  %v183 = vld [vmem:[%s0 + $0x470] sm:$0xff]
  %v184 = vld [vmem:[%s0 + $0x478] sm:$0xff]
  %v185 = vld [vmem:[%s0 + $0x480] sm:$0xff]
  %v186 = vld [vmem:[%s0 + $0x488] sm:$0xff]
  %v187 = vld [vmem:[%s0 + $0x490] sm:$0xff]
  %v188 = vld [vmem:[%s0 + $0x498] sm:$0xff]
  %v189 = vld [vmem:[%s0 + $0x4a0] sm:$0xff]
  %v190 = vld [vmem:[%s0 + $0x4a8] sm:$0xff]
  %v191 = vld [vmem:[%s0 + $0x4b0] sm:$0xff]
  %v192 = vld [vmem:[%s0 + $0x4b8] sm:$0xff]
  %v193 = vld [vmem:[%s0 + $0x4c0] sm:$0xff]
  %v194 = vld [vmem:[%s0 + $0x4c8] sm:$0xff]
  %v195 = vld [vmem:[%s0 + $0x4d0] sm:$0xff]
  %v196 = vld [vmem:[%s0 + $0x4d8] sm:$0xff]
  %v197 = vld [vmem:[%s0 + $0x4e0] sm:$0xff]
  %v198 = vld [vmem:[%s0 + $0x4e8] sm:$0xff]
  %v199 = vld [vmem:[%s0 + $0x4f0] sm:$0xff]
  %v200 = vld [vmem:[%s0 + $0x4f8] sm:$0xff]
  %v201 = vld [vmem:[%s0 + $0x500] sm:$0xff]
  %v202 = vld [vmem:[%s0 + $0x508] sm:$0xff]
  %v203 = vld [vmem:[%s0 + $0x510] sm:$0xff]
  %v204 = vld [vmem:[%s0 + $0x518] sm:$0xff]
  %v205 = vld [vmem:[%s0 + $0x520] sm:$0xff]
  %v206 = vld [vmem:[%s0 + $0x528] sm:$0xff]
  %v207 = vld [vmem:[%s0 + $0x530] sm:$0xff]
  %v208 = vld [vmem:[%s0 + $0x538] sm:$0xff]
  %v209 = vld [vmem:[%s0 + $0x540] sm:$0xff]
  %v210 = vld [vmem:[%s0 + $0x548] sm:$0xff]
  %v211 = vld [vmem:[%s0 + $0x550] sm:$0xff]
  %v212 = vld [vmem:[%s0 + $0x558] sm:$0xff]
  %v213 = vld [vmem:[%s0 + $0x560] sm:$0xff]
  %v214 = vld [vmem:[%s0 + $0x568] sm:$0xff]
  %v215 = vld [vmem:[%s0 + $0x570] sm:$0xff]
  %v216 = vld [vmem:[%s0 + $0x578] sm:$0xff]
  %v217 = vld [vmem:[%s0 + $0x580] sm:$0xff]
  %v218 = vld [vmem:[%s0 + $0x588] sm:$0xff]
  %v219 = vld [vmem:[%s0 + $0x590] sm:$0xff]
  %v220 = vld [vmem:[%s0 + $0x598] sm:$0xff]
  %v221 = vld [vmem:[%s0 + $0x5a0] sm:$0xff]
  %v222 = vld [vmem:[%s0 + $0x5a8] sm:$0xff]
  %v223 = vld [vmem:[%s0 + $0x5b0] sm:$0xff]
  %v224 = vld [vmem:[%s0 + $0x5b8] sm:$0xff]
  %v225 = vld [vmem:[%s0 + $0x5c0] sm:$0xff]
  %v226 = vld [vmem:[%s0 + $0x5c8] sm:$0xff]
  %v227 = vld [vmem:[%s0 + $0x5d0] sm:$0xff]
  %v228 = vld [vmem:[%s0 + $0x5d8] sm:$0xff]
  %v229 = vld [vmem:[%s0 + $0x5e0] sm:$0xff]
  %v230 = vld [vmem:[%s0 + $0x5e8] sm:$0xff]
  %v231 = vld [vmem:[%s0 + $0x5f0] sm:$0xff]
  %v232 = vld [vmem:[%s0 + $0x5f8] sm:$0xff]
  %v233 = vld [vmem:[%s0 + $0x600] sm:$0xff]
  %v234 = vld [vmem:[%s0 + $0x608] sm:$0xff]
  %v235 = vld [vmem:[%s0 + $0x610] sm:$0xff]
  %v236 = vld [vmem:[%s0 + $0x618] sm:$0xff]
  %v237 = vld [vmem:[%s0 + $0x620] sm:$0xff]
  %v238 = vld [vmem:[%s0 + $0x628] sm:$0xff]
  %v239 = vld [vmem:[%s0 + $0x630] sm:$0xff]
  %v240 = vld [vmem:[%s0 + $0x638] sm:$0xff]
  %v241 = vld [vmem:[%s0 + $0x640] sm:$0xff]
  %v242 = vld [vmem:[%s0 + $0x648] sm:$0xff]
  %v243 = vld [vmem:[%s0 + $0x650] sm:$0xff]
  %v244 = vld [vmem:[%s0 + $0x658] sm:$0xff]
  %v245 = vld [vmem:[%s0 + $0x660] sm:$0xff]
  %v246 = vld [vmem:[%s0 + $0x668] sm:$0xff]
  %v247 = vld [vmem:[%s0 + $0x670] sm:$0xff]
  %v248 = vld [vmem:[%s0 + $0x678] sm:$0xff]
  %v249 = vld [vmem:[%s0 + $0x680] sm:$0xff]
  %v250 = vld [vmem:[%s0 + $0x688] sm:$0xff]
  %v251 = vld [vmem:[%s0 + $0x690] sm:$0xff]
  %v252 = vld [vmem:[%s0 + $0x698] sm:$0xff]
  %v253 = vld [vmem:[%s0 + $0x6a0] sm:$0xff]
  %v254 = vld [vmem:[%s0 + $0x6a8] sm:$0xff]
  %v255 = vld [vmem:[%s0 + $0x6b0] sm:$0xff]
  %v256 = vld [vmem:[%s0 + $0x6b8] sm:$0xff]
  %v257 = vld [vmem:[%s0 + $0x6c0] sm:$0xff]
  %v258 = vld [vmem:[%s0 + $0x6c8] sm:$0xff]
  %v259 = vld [vmem:[%s0 + $0x6d0] sm:$0xff]
  %v260 = vld [vmem:[%s0 + $0x6d8] sm:$0xff]
  %v261 = vld [vmem:[%s0 + $0x6e0] sm:$0xff]
  %v262 = vld [vmem:[%s0 + $0x6e8] sm:$0xff]
  %v263 = vld [vmem:[%s0 + $0x6f0] sm:$0xff]
  %v264 = vld [vmem:[%s0 + $0x6f8] sm:$0xff]
  %v265 = vld [vmem:[%s0 + $0x700] sm:$0xff]
  %v266 = vld [vmem:[%s0 + $0x708] sm:$0xff]
  %v267 = vld [vmem:[%s0 + $0x710] sm:$0xff]
  %v268 = vld [vmem:[%s0 + $0x718] sm:$0xff]
  %v269 = vld [vmem:[%s0 + $0x720] sm:$0xff]
  %v270 = vld [vmem:[%s0 + $0x728] sm:$0xff]
  %v271 = vld [vmem:[%s0 + $0x730] sm:$0xff]
  %v272 = vld [vmem:[%s0 + $0x738] sm:$0xff]
  %v273 = vld [vmem:[%s0 + $0x740] sm:$0xff]
  %v274 = vld [vmem:[%s0 + $0x748] sm:$0xff]
  %v275 = vld [vmem:[%s0 + $0x750] sm:$0xff]
  %v276 = vld [vmem:[%s0 + $0x758] sm:$0xff]
  %v277 = vld [vmem:[%s0 + $0x760] sm:$0xff]
  %v278 = vld [vmem:[%s0 + $0x768] sm:$0xff]
  %v279 = vld [vmem:[%s0 + $0x770] sm:$0xff]
  %v280 = vld [vmem:[%s0 + $0x778] sm:$0xff]
  %v281 = vld [vmem:[%s0 + $0x780] sm:$0xff]
  %v282 = vld [vmem:[%s0 + $0x788] sm:$0xff]
  %v283 = vld [vmem:[%s0 + $0x790] sm:$0xff]
  %v284 = vld [vmem:[%s0 + $0x798] sm:$0xff]
  %v285 = vld [vmem:[%s0 + $0x7a0] sm:$0xff]
  %v286 = vld [vmem:[%s0 + $0x7a8] sm:$0xff]
  %v287 = vld [vmem:[%s0 + $0x7b0] sm:$0xff]
  %v288 = vld [vmem:[%s0 + $0x7b8] sm:$0xff]
  %v289 = vld [vmem:[%s0 + $0x7c0] sm:$0xff]
  %v290 = vld [vmem:[%s0 + $0x7c8] sm:$0xff]
  %v291 = vld [vmem:[%s0 + $0x7d0] sm:$0xff]
  %v292 = vld [vmem:[%s0 + $0x7d8] sm:$0xff]
  %v293 = vld [vmem:[%s0 + $0x7e0] sm:$0xff]
  %v294 = vld [vmem:[%s0 + $0x7e8] sm:$0xff]
  %v295 = vld [vmem:[%s0 + $0x7f0] sm:$0xff]
  %v296 = vld [vmem:[%s0 + $0x7f8] sm:$0xff]
  %v297 = vld [vmem:[%s0 + $0x800] sm:$0xff]
  %v298 = vld [vmem:[%s0 + $0x808] sm:$0xff]
  %v299 = vld [vmem:[%s0 + $0x810] sm:$0xff]
  %v300 = vld [vmem:[%s0 + $0x818] sm:$0xff]
  %v301 = vld [vmem:[%s0 + $0x820] sm:$0xff]
  %v302 = vld [vmem:[%s0 + $0x828] sm:$0xff]
  %v303 = vld [vmem:[%s0 + $0x830] sm:$0xff]
  %v304 = vld [vmem:[%s0 + $0x838] sm:$0xff]
  %v305 = vld [vmem:[%s0 + $0x840] sm:$0xff]
  %v306 = vld [vmem:[%s0 + $0x848] sm:$0xff]
  %v307 = vld [vmem:[%s0 + $0x850] sm:$0xff]
  %v308 = vld [vmem:[%s0 + $0x858] sm:$0xff]
  %v309 = vld [vmem:[%s0 + $0x860] sm:$0xff]
  %v310 = vld [vmem:[%s0 + $0x868] sm:$0xff]
  %v311 = vld [vmem:[%s0 + $0x870] sm:$0xff]
  %v312 = vld [vmem:[%s0 + $0x878] sm:$0xff]
  %v313 = vld [vmem:[%s0 + $0x880] sm:$0xff]
  %v314 = vld [vmem:[%s0 + $0x888] sm:$0xff]
  %v315 = vld [vmem:[%s0 + $0x890] sm:$0xff]
  %v316 = vld [vmem:[%s0 + $0x898] sm:$0xff]
  %v317 = vld [vmem:[%s0 + $0x8a0] sm:$0xff]
  %v318 = vld [vmem:[%s0 + $0x8a8] sm:$0xff]
  %v319 = vld [vmem:[%s0 + $0x8b0] sm:$0xff]
  %v320 = vld [vmem:[%s0 + $0x8b8] sm:$0xff]
  %v321 = vld [vmem:[%s0 + $0x8c0] sm:$0xff]
  %v322 = vld [vmem:[%s0 + $0x8c8] sm:$0xff]
  %v323 = vld [vmem:[%s0 + $0x8d0] sm:$0xff]
  %v324 = vld [vmem:[%s0 + $0x8d8] sm:$0xff]
  %v325 = vld [vmem:[%s0 + $0x8e0] sm:$0xff]
  %v326 = vld [vmem:[%s0 + $0x8e8] sm:$0xff]
  %v327 = vld [vmem:[%s0 + $0x8f0] sm:$0xff]
  %v328 = vld [vmem:[%s0 + $0x8f8] sm:$0xff]
  %v329 = vld [vmem:[%s0 + $0x900] sm:$0xff]
  %v330 = vld [vmem:[%s0 + $0x908] sm:$0xff]
  %v331 = vld [vmem:[%s0 + $0x910] sm:$0xff]
  %v332 = vld [vmem:[%s0 + $0x918] sm:$0xff]
  %v333 = vld [vmem:[%s0 + $0x920] sm:$0xff]
  %v334 = vld [vmem:[%s0 + $0x928] sm:$0xff]
  %v335 = vld [vmem:[%s0 + $0x930] sm:$0xff]
  %v336 = vld [vmem:[%s0 + $0x938] sm:$0xff]
  %v337 = vld [vmem:[%s0 + $0x940] sm:$0xff]
  %v338 = vld [vmem:[%s0 + $0x948] sm:$0xff]
  %v339 = vld [vmem:[%s0 + $0x950] sm:$0xff]
  %v340 = vld [vmem:[%s0 + $0x958] sm:$0xff]
  %v341 = vld [vmem:[%s0 + $0x960] sm:$0xff]
  %v342 = vld [vmem:[%s0 + $0x968] sm:$0xff]
  %v343 = vld [vmem:[%s0 + $0x970] sm:$0xff]
  %v344 = vld [vmem:[%s0 + $0x978] sm:$0xff]
  %v345 = vld [vmem:[%s0 + $0x980] sm:$0xff]
  %v346 = vld [vmem:[%s0 + $0x988] sm:$0xff]
  %v347 = vld [vmem:[%s0 + $0x990] sm:$0xff]
  %v348 = vld [vmem:[%s0 + $0x998] sm:$0xff]
  %v349 = vld [vmem:[%s0 + $0x9a0] sm:$0xff]
  %v350 = vld [vmem:[%s0 + $0x9a8] sm:$0xff]
  %v351 = vld [vmem:[%s0 + $0x9b0] sm:$0xff]
  %v352 = vld [vmem:[%s0 + $0x9b8] sm:$0xff]
  %v353 = vld [vmem:[%s0 + $0x9c0] sm:$0xff]
  %v354 = vld [vmem:[%s0 + $0x9c8] sm:$0xff]
  %v355 = vld [vmem:[%s0 + $0x9d0] sm:$0xff]
  %v356 = vld [vmem:[%s0 + $0x9d8] sm:$0xff]
  %v357 = vld [vmem:[%s0 + $0x9e0] sm:$0xff]
  %v358 = vld [vmem:[%s0 + $0x9e8] sm:$0xff]
  %v359 = vld [vmem:[%s0 + $0x9f0] sm:$0xff]
  %v360 = vld [vmem:[%s0 + $0x9f8] sm:$0xff]
  %v361 = vld [vmem:[%s0 + $0xa00] sm:$0xff]
  %v362 = vld [vmem:[%s0 + $0xa08] sm:$0xff]
  %v363 = vld [vmem:[%s0 + $0xa10] sm:$0xff]
  %v364 = vld [vmem:[%s0 + $0xa18] sm:$0xff]
  %v365 = vld [vmem:[%s0 + $0xa20] sm:$0xff]
  %v366 = vld [vmem:[%s0 + $0xa28] sm:$0xff]
  %v367 = vld [vmem:[%s0 + $0xa30] sm:$0xff]
  %v368 = vld [vmem:[%s0 + $0xa38] sm:$0xff]
  %v369 = vld [vmem:[%s0 + $0xa40] sm:$0xff]
  %v370 = vld [vmem:[%s0 + $0xa48] sm:$0xff]
  %v371 = vld [vmem:[%s0 + $0xa50] sm:$0xff]
  %v372 = vld [vmem:[%s0 + $0xa58] sm:$0xff]
  %v373 = vld [vmem:[%s0 + $0xa60] sm:$0xff]
  %v374 = vld [vmem:[%s0 + $0xa68] sm:$0xff]
  %v375 = vld [vmem:[%s0 + $0xa70] sm:$0xff]
  %v376 = vld [vmem:[%s0 + $0xa78] sm:$0xff]
  %v377 = vld [vmem:[%s0 + $0xa80] sm:$0xff]
  %v378 = vld [vmem:[%s0 + $0xa88] sm:$0xff]
  %v379 = vld [vmem:[%s0 + $0xa90] sm:$0xff]
  %v380 = vld [vmem:[%s0 + $0xa98] sm:$0xff]
  %v381 = vld [vmem:[%s0 + $0xaa0] sm:$0xff]
  %v382 = vld [vmem:[%s0 + $0xaa8] sm:$0xff]
  %v383 = vld [vmem:[%s0 + $0xab0] sm:$0xff]
  %v384 = vld [vmem:[%s0 + $0xab8] sm:$0xff]
  %v385 = vld [vmem:[%s0 + $0xac0] sm:$0xff]
  %v386 = vld [vmem:[%s0 + $0xac8] sm:$0xff]
  %v387 = vld [vmem:[%s0 + $0xad0] sm:$0xff]
  %v388 = vld [vmem:[%s0 + $0xad8] sm:$0xff]
  %v389 = vld [vmem:[%s0 + $0xae0] sm:$0xff]
  %v390 = vld [vmem:[%s0 + $0xae8] sm:$0xff]
  %v391 = vld [vmem:[%s0 + $0xaf0] sm:$0xff]
  %v392 = vld [vmem:[%s0 + $0xaf8] sm:$0xff]
  %v393 = vld [vmem:[%s0 + $0xb00] sm:$0xff]
  %v394 = vld [vmem:[%s0 + $0xb08] sm:$0xff]
  %v395 = vld [vmem:[%s0 + $0xb10] sm:$0xff]
  %v396 = vld [vmem:[%s0 + $0xb18] sm:$0xff]
  %v397 = vld [vmem:[%s0 + $0xb20] sm:$0xff]
  %v398 = vld [vmem:[%s0 + $0xb28] sm:$0xff]
  %v399 = vld [vmem:[%s0 + $0xb30] sm:$0xff]
  %v400 = vld [vmem:[%s0 + $0xb38] sm:$0xff]
  %v401 = vld [vmem:[%s0 + $0xb40] sm:$0xff]
  %v402 = vld [vmem:[%s0 + $0xb48] sm:$0xff]
  %v403 = vld [vmem:[%s0 + $0xb50] sm:$0xff]
  %v404 = vld [vmem:[%s0 + $0xb58] sm:$0xff]
  %v405 = vld [vmem:[%s0 + $0xb60] sm:$0xff]
  %v406 = vld [vmem:[%s0 + $0xb68] sm:$0xff]
  %v407 = vld [vmem:[%s0 + $0xb70] sm:$0xff]
  %v408 = vld [vmem:[%s0 + $0xb78] sm:$0xff]
  %v409 = vld [vmem:[%s0 + $0xb80] sm:$0xff]
  %v410 = vld [vmem:[%s0 + $0xb88] sm:$0xff]
  %v411 = vld [vmem:[%s0 + $0xb90] sm:$0xff]
  %v412 = vld [vmem:[%s0 + $0xb98] sm:$0xff]
  %v413 = vld [vmem:[%s0 + $0xba0] sm:$0xff]
  %v414 = vld [vmem:[%s0 + $0xba8] sm:$0xff]
  %v415 = vld [vmem:[%s0 + $0xbb0] sm:$0xff]
  %v416 = vld [vmem:[%s0 + $0xbb8] sm:$0xff]
  %v417 = vld [vmem:[%s0 + $0xbc0] sm:$0xff]
  %v418 = vld [vmem:[%s0 + $0xbc8] sm:$0xff]
  %v419 = vld [vmem:[%s0 + $0xbd0] sm:$0xff]
  %v420 = vld [vmem:[%s0 + $0xbd8] sm:$0xff]
  %v421 = vld [vmem:[%s0 + $0xbe0] sm:$0xff]
  %v422 = vld [vmem:[%s0 + $0xbe8] sm:$0xff]
  %v423 = vld [vmem:[%s0 + $0xbf0] sm:$0xff]
  %v424 = vld [vmem:[%s0 + $0xbf8] sm:$0xff]
  %v425 = vld [vmem:[%s0 + $0xc00] sm:$0xff]
  %v426 = vld [vmem:[%s0 + $0xc08] sm:$0xff]
  %v427 = vld [vmem:[%s0 + $0xc10] sm:$0xff]
  %v428 = vld [vmem:[%s0 + $0xc18] sm:$0xff]
  %v429 = vld [vmem:[%s0 + $0xc20] sm:$0xff]
  %v430 = vld [vmem:[%s0 + $0xc28] sm:$0xff]
  %v431 = vld [vmem:[%s0 + $0xc30] sm:$0xff]
  %v432 = vld [vmem:[%s0 + $0xc38] sm:$0xff]
  %v433 = vld [vmem:[%s0 + $0xc40] sm:$0xff]
  %v434 = vld [vmem:[%s0 + $0xc48] sm:$0xff]
  %v435 = vld [vmem:[%s0 + $0xc50] sm:$0xff]
  %v436 = vld [vmem:[%s0 + $0xc58] sm:$0xff]
  %v437 = vld [vmem:[%s0 + $0xc60] sm:$0xff]
  %v438 = vld [vmem:[%s0 + $0xc68] sm:$0xff]
  %v439 = vld [vmem:[%s0 + $0xc70] sm:$0xff]
  %v440 = vld [vmem:[%s0 + $0xc78] sm:$0xff]
  %v441 = vld [vmem:[%s0 + $0xc80] sm:$0xff]
  %v442 = vld [vmem:[%s0 + $0xc88] sm:$0xff]
  %v443 = vld [vmem:[%s0 + $0xc90] sm:$0xff]
  %v444 = vld [vmem:[%s0 + $0xc98] sm:$0xff]
  %v445 = vld [vmem:[%s0 + $0xca0] sm:$0xff]
  %v446 = vld [vmem:[%s0 + $0xca8] sm:$0xff]
  %v447 = vld [vmem:[%s0 + $0xcb0] sm:$0xff]
  %v448 = vld [vmem:[%s0 + $0xcb8] sm:$0xff]
  %v449 = vld [vmem:[%s0 + $0xcc0] sm:$0xff]
  %v450 = vld [vmem:[%s0 + $0xcc8] sm:$0xff]
  %v451 = vld [vmem:[%s0 + $0xcd0] sm:$0xff]
  %v452 = vld [vmem:[%s0 + $0xcd8] sm:$0xff]
  %v453 = vld [vmem:[%s0 + $0xce0] sm:$0xff]
  %v454 = vld [vmem:[%s0 + $0xce8] sm:$0xff]
  %v455 = vld [vmem:[%s0 + $0xcf0] sm:$0xff]
  %v456 = vld [vmem:[%s0 + $0xcf8] sm:$0xff]
  %v457 = vld [vmem:[%s0 + $0xd00] sm:$0xff]
  %v458 = vld [vmem:[%s0 + $0xd08] sm:$0xff]
  %v459 = vld [vmem:[%s0 + $0xd10] sm:$0xff]
  %v460 = vld [vmem:[%s0 + $0xd18] sm:$0xff]
  %v461 = vld [vmem:[%s0 + $0xd20] sm:$0xff]
  %v462 = vld [vmem:[%s0 + $0xd28] sm:$0xff]
  %v463 = vld [vmem:[%s0 + $0xd30] sm:$0xff]
  %v464 = vld [vmem:[%s0 + $0xd38] sm:$0xff]
  %v465 = vld [vmem:[%s0 + $0xd40] sm:$0xff]
  %v466 = vld [vmem:[%s0 + $0xd48] sm:$0xff]
  %v467 = vld [vmem:[%s0 + $0xd50] sm:$0xff]
  %v468 = vld [vmem:[%s0 + $0xd58] sm:$0xff]
  %v469 = vld [vmem:[%s0 + $0xd60] sm:$0xff]
  %v470 = vld [vmem:[%s0 + $0xd68] sm:$0xff]
  %v471 = vld [vmem:[%s0 + $0xd70] sm:$0xff]
  %v472 = vld [vmem:[%s0 + $0xd78] sm:$0xff]
  %v473 = vld [vmem:[%s0 + $0xd80] sm:$0xff]
  %v474 = vld [vmem:[%s0 + $0xd88] sm:$0xff]
  %v475 = vld [vmem:[%s0 + $0xd90] sm:$0xff]
  %v476 = vld [vmem:[%s0 + $0xd98] sm:$0xff]
  %v477 = vld [vmem:[%s0 + $0xda0] sm:$0xff]
  %v478 = vld [vmem:[%s0 + $0xda8] sm:$0xff]
  %v479 = vld [vmem:[%s0 + $0xdb0] sm:$0xff]
  %v480 = vld [vmem:[%s0 + $0xdb8] sm:$0xff]
  %v481 = vld [vmem:[%s0 + $0xdc0] sm:$0xff]
  %v482 = vld [vmem:[%s0 + $0xdc8] sm:$0xff]
  %v483 = vld [vmem:[%s0 + $0xdd0] sm:$0xff]
  %v484 = vld [vmem:[%s0 + $0xdd8] sm:$0xff]
  %v485 = vld [vmem:[%s0 + $0xde0] sm:$0xff]
  %v486 = vld [vmem:[%s0 + $0xde8] sm:$0xff]
  %v487 = vld [vmem:[%s0 + $0xdf0] sm:$0xff]
  %v488 = vld [vmem:[%s0 + $0xdf8] sm:$0xff]
  %v489 = vld [vmem:[%s0 + $0xe00] sm:$0xff]
  %v490 = vld [vmem:[%s0 + $0xe08] sm:$0xff]
  %v491 = vld [vmem:[%s0 + $0xe10] sm:$0xff]
  %v492 = vld [vmem:[%s0 + $0xe18] sm:$0xff]
  %v493 = vld [vmem:[%s0 + $0xe20] sm:$0xff]
  %v494 = vld [vmem:[%s0 + $0xe28] sm:$0xff]
  %v495 = vld [vmem:[%s0 + $0xe30] sm:$0xff]
  %v496 = vld [vmem:[%s0 + $0xe38] sm:$0xff]
  %v497 = vld [vmem:[%s0 + $0xe40] sm:$0xff]
  %v498 = vld [vmem:[%s0 + $0xe48] sm:$0xff]
  %v499 = vld [vmem:[%s0 + $0xe50] sm:$0xff]
  %v500 = vld [vmem:[%s0 + $0xe58] sm:$0xff]
  %v501 = vld [vmem:[%s0 + $0xe60] sm:$0xff]
  %v502 = vld [vmem:[%s0 + $0xe68] sm:$0xff]
  %v503 = vld [vmem:[%s0 + $0xe70] sm:$0xff]
  %v504 = vld [vmem:[%s0 + $0xe78] sm:$0xff]
  %v505 = vld [vmem:[%s0 + $0xe80] sm:$0xff]
  %v506 = vld [vmem:[%s0 + $0xe88] sm:$0xff]
  %v507 = vld [vmem:[%s0 + $0xe90] sm:$0xff]
  %v508 = vld [vmem:[%s0 + $0xe98] sm:$0xff]
  %v509 = vld [vmem:[%s0 + $0xea0] sm:$0xff]
  %v510 = vld [vmem:[%s0 + $0xea8] sm:$0xff]
  %v511 = vld [vmem:[%s0 + $0xeb0] sm:$0xff]
  %v512 = vld [vmem:[%s0 + $0xeb8] sm:$0xff]
  %v513 = vld [vmem:[%s0 + $0xec0] sm:$0xff]
  %v514 = vld [vmem:[%s0 + $0xec8] sm:$0xff]
  %v515 = vld [vmem:[%s0 + $0xed0] sm:$0xff]
  %v516 = vld [vmem:[%s0 + $0xed8] sm:$0xff]
  %v517 = vld [vmem:[%s0 + $0xee0] sm:$0xff]
  %v518 = vld [vmem:[%s0 + $0xee8] sm:$0xff]
  %v519 = vld [vmem:[%s0 + $0xef0] sm:$0xff]
  %v520 = vld [vmem:[%s0 + $0xef8] sm:$0xff]
  %v521 = vld [vmem:[%s0 + $0xf00] sm:$0xff]
  %v522 = vld [vmem:[%s0 + $0xf08] sm:$0xff]
  %v523 = vld [vmem:[%s0 + $0xf10] sm:$0xff]
  %v524 = vld [vmem:[%s0 + $0xf18] sm:$0xff]
  %v525 = vld [vmem:[%s0 + $0xf20] sm:$0xff]
  %v526 = vld [vmem:[%s0 + $0xf28] sm:$0xff]
  %v527 = vld [vmem:[%s0 + $0xf30] sm:$0xff]
  %v528 = vld [vmem:[%s0 + $0xf38] sm:$0xff]
  %v529 = vld [vmem:[%s0 + $0xf40] sm:$0xff]
  %v530 = vld [vmem:[%s0 + $0xf48] sm:$0xff]
  %v531 = vld [vmem:[%s0 + $0xf50] sm:$0xff]
  %v532 = vld [vmem:[%s0 + $0xf58] sm:$0xff]
  %v533 = vld [vmem:[%s0 + $0xf60] sm:$0xff]
  %v534 = vld [vmem:[%s0 + $0xf68] sm:$0xff]
  %v535 = vld [vmem:[%s0 + $0xf70] sm:$0xff]
  %v536 = vld [vmem:[%s0 + $0xf78] sm:$0xff]
  %v537 = vld [vmem:[%s0 + $0xf80] sm:$0xff]
  %v538 = vld [vmem:[%s0 + $0xf88] sm:$0xff]
  %v539 = vld [vmem:[%s0 + $0xf90] sm:$0xff]
  %v540 = vld [vmem:[%s0 + $0xf98] sm:$0xff]
  %v541 = vld [vmem:[%s0 + $0xfa0] sm:$0xff]
  %v542 = vld [vmem:[%s0 + $0xfa8] sm:$0xff]
  %v543 = vld [vmem:[%s0 + $0xfb0] sm:$0xff]
  %v544 = vld [vmem:[%s0 + $0xfb8] sm:$0xff]
  %v545 = vld [vmem:[%s0 + $0xfc0] sm:$0xff]
  %v546 = vld [vmem:[%s0 + $0xfc8] sm:$0xff]
  %v547 = vld [vmem:[%s0 + $0xfd0] sm:$0xff]
  %v548 = vld [vmem:[%s0 + $0xfd8] sm:$0xff]
  %v549 = vld [vmem:[%s0 + $0xfe0] sm:$0xff]
  %v550 = vld [vmem:[%s0 + $0xfe8] sm:$0xff]
  %v551 = vld [vmem:[%s0 + $0xff0] sm:$0xff]
  %v552 = vld [vmem:[%s0 + $0xff8] sm:$0xff]
  %v553 = vld [vmem:[%s0 + $0x1000] sm:$0xff]
  %v554 = vld [vmem:[%s0 + $0x1008] sm:$0xff]
  %v555 = vld [vmem:[%s0 + $0x1010] sm:$0xff]
  %v556 = vld [vmem:[%s0 + $0x1018] sm:$0xff]
  %v557 = vld [vmem:[%s0 + $0x1020] sm:$0xff]
  %v558 = vld [vmem:[%s0 + $0x1028] sm:$0xff]
  %v559 = vld [vmem:[%s0 + $0x1030] sm:$0xff]
  %v560 = vld [vmem:[%s0 + $0x1038] sm:$0xff]
  %v561 = vld [vmem:[%s0 + $0x1040] sm:$0xff]
  %v562 = vld [vmem:[%s0 + $0x1048] sm:$0xff]
  %v563 = vld [vmem:[%s0 + $0x1050] sm:$0xff]
  %v564 = vld [vmem:[%s0 + $0x1058] sm:$0xff]
  %v565 = vld [vmem:[%s0 + $0x1060] sm:$0xff]
  %v566 = vld [vmem:[%s0 + $0x1068] sm:$0xff]
  %v567 = vld [vmem:[%s0 + $0x1070] sm:$0xff]
  %v568 = vld [vmem:[%s0 + $0x1078] sm:$0xff]
  %v569 = vld [vmem:[%s0 + $0x1080] sm:$0xff]
  %v570 = vld [vmem:[%s0 + $0x1088] sm:$0xff]
  %v571 = vld [vmem:[%s0 + $0x1090] sm:$0xff]
  %v572 = vld [vmem:[%s0 + $0x1098] sm:$0xff]
  %v573 = vld [vmem:[%s0 + $0x10a0] sm:$0xff]
  %v574 = vld [vmem:[%s0 + $0x10a8] sm:$0xff]
  %v575 = vld [vmem:[%s0 + $0x10b0] sm:$0xff]
  %v576 = vld [vmem:[%s0 + $0x10b8] sm:$0xff]
  %v577 = vld [vmem:[%s0 + $0x10c0] sm:$0xff]
  %v578 = vld [vmem:[%s0 + $0x10c8] sm:$0xff]
  %v579 = vld [vmem:[%s0 + $0x10d0] sm:$0xff]
  %v580 = vld [vmem:[%s0 + $0x10d8] sm:$0xff]
  %v581 = vld [vmem:[%s0 + $0x10e0] sm:$0xff]
  %v582 = vld [vmem:[%s0 + $0x10e8] sm:$0xff]
  %v583 = vld [vmem:[%s0 + $0x10f0] sm:$0xff]
  %v584 = vld [vmem:[%s0 + $0x10f8] sm:$0xff]
  %v585 = vld [vmem:[%s0 + $0x1100] sm:$0xff]
  %v586 = vld [vmem:[%s0 + $0x1108] sm:$0xff]
  %v587 = vld [vmem:[%s0 + $0x1110] sm:$0xff]
  %v588 = vld [vmem:[%s0 + $0x1118] sm:$0xff]
  %v589 = vld [vmem:[%s0 + $0x1120] sm:$0xff]
  %v590 = vld [vmem:[%s0 + $0x1128] sm:$0xff]
  %v591 = vld [vmem:[%s0 + $0x1130] sm:$0xff]
  %v592 = vld [vmem:[%s0 + $0x1138] sm:$0xff]
  %v593 = vld [vmem:[%s0 + $0x1140] sm:$0xff]
  %v594 = vld [vmem:[%s0 + $0x1148] sm:$0xff]
  %v595 = vld [vmem:[%s0 + $0x1150] sm:$0xff]
  %v596 = vld [vmem:[%s0 + $0x1158] sm:$0xff]
  %v597 = vld [vmem:[%s0 + $0x1160] sm:$0xff]
  %v598 = vld [vmem:[%s0 + $0x1168] sm:$0xff]
  %v599 = vld [vmem:[%s0 + $0x1170] sm:$0xff]
  %v600 = vld [vmem:[%s0 + $0x1178] sm:$0xff]
  %v601 = vld [vmem:[%s0 + $0x1180] sm:$0xff]
  %v602 = vld [vmem:[%s0 + $0x1188] sm:$0xff]
  %v603 = vld [vmem:[%s0 + $0x1190] sm:$0xff]
  %v604 = vld [vmem:[%s0 + $0x1198] sm:$0xff]
  %v605 = vld [vmem:[%s0 + $0x11a0] sm:$0xff]
  %v606 = vld [vmem:[%s0 + $0x11a8] sm:$0xff]
  %v607 = vld [vmem:[%s0 + $0x11b0] sm:$0xff]
  %v608 = vld [vmem:[%s0 + $0x11b8] sm:$0xff]
  %v609 = vld [vmem:[%s0 + $0x11c0] sm:$0xff]
  %v610 = vld [vmem:[%s0 + $0x11c8] sm:$0xff]
  %v611 = vld [vmem:[%s0 + $0x11d0] sm:$0xff]
  %v612 = vld [vmem:[%s0 + $0x11d8] sm:$0xff]
  %v613 = vld [vmem:[%s0 + $0x11e0] sm:$0xff]
  %v614 = vld [vmem:[%s0 + $0x11e8] sm:$0xff]
  %v615 = vld [vmem:[%s0 + $0x11f0] sm:$0xff]
  %v616 = vld [vmem:[%s0 + $0x11f8] sm:$0xff]
  %v617 = vld [vmem:[%s2] sm:$0xff]
  %v618 = vld [vmem:[%s2 + $0x8] sm:$0xff]
  %v619 = vld [vmem:[%s2 + $0x10] sm:$0xff]
  %v620 = vld [vmem:[%s2 + $0x18] sm:$0xff]
  %v621 = vld [vmem:[%s3] sm:$0x1]
  %v623 = vperm.slane %v621, 0
  %vm625 = vcmask 261120
  %v627 = vsel %vm625, %v41, 0
  %v630 = vsel %vm625, %v42, 0
  %v633 = vsel %vm625, %v43, 0
  %v636 = vsel %vm625, %v44, 0
  %v639 = vsel %vm625, %v45, 0
  %v642 = vsel %vm625, %v46, 0
  %v645 = vsel %vm625, %v47, 0
  %v648 = vsel %vm625, %v48, 0
  %v651 = vsel %vm625, %v49, 0
  %v654 = vsel %vm625, %v50, 0
  %v657 = vsel %vm625, %v51, 0
  %v660 = vsel %vm625, %v52, 0
  %v663 = vsel %vm625, %v53, 0
  %v666 = vsel %vm625, %v54, 0
  %v669 = vsel %vm625, %v55, 0
  %v672 = vsel %vm625, %v56, 0
  %v675 = vsel %vm625, %v57, 0
  %v678 = vsel %vm625, %v58, 0
  %v681 = vsel %vm625, %v59, 0
  %v684 = vsel %vm625, %v60, 0
  %v687 = vsel %vm625, %v61, 0
  %v690 = vsel %vm625, %v62, 0
  %v693 = vsel %vm625, %v63, 0
  %v696 = vsel %vm625, %v64, 0
  %v699 = vsel %vm625, %v65, 0
  %v702 = vsel %vm625, %v66, 0
  %v705 = vsel %vm625, %v67, 0
  %v708 = vsel %vm625, %v68, 0
  %v711 = vsel %vm625, %v69, 0
  %v714 = vsel %vm625, %v70, 0
  %v717 = vsel %vm625, %v71, 0
  %v720 = vsel %vm625, %v72, 0
  %v723 = vsel %vm625, %v73, 0
  %v726 = vsel %vm625, %v74, 0
  %v729 = vsel %vm625, %v75, 0
  %v732 = vsel %vm625, %v76, 0
  %v735 = vsel %vm625, %v77, 0
  %v738 = vsel %vm625, %v78, 0
  %v741 = vsel %vm625, %v79, 0
  %v744 = vsel %vm625, %v80, 0
  %v747 = vsel %vm625, %v81, 0
  %v750 = vsel %vm625, %v82, 0
  %v753 = vsel %vm625, %v83, 0
  %v756 = vsel %vm625, %v84, 0
  %v759 = vsel %vm625, %v85, 0
  %v762 = vsel %vm625, %v86, 0
  %v765 = vsel %vm625, %v87, 0
  %v768 = vsel %vm625, %v88, 0
  %v771 = vsel %vm625, %v89, 0
  %v774 = vsel %vm625, %v90, 0
  %v777 = vsel %vm625, %v91, 0
  %v780 = vsel %vm625, %v92, 0
  %v783 = vsel %vm625, %v93, 0
  %v786 = vsel %vm625, %v94, 0
  %v789 = vsel %vm625, %v95, 0
  %v792 = vsel %vm625, %v96, 0
  %v795 = vsel %vm625, %v97, 0
  %v798 = vsel %vm625, %v98, 0
  %v801 = vsel %vm625, %v99, 0
  %v804 = vsel %vm625, %v100, 0
  %v807 = vsel %vm625, %v101, 0
  %v810 = vsel %vm625, %v102, 0
  %v813 = vsel %vm625, %v103, 0
  %v816 = vsel %vm625, %v104, 0
  %v819 = vsel %vm625, %v105, 0
  %v822 = vsel %vm625, %v106, 0
  %v825 = vsel %vm625, %v107, 0
  %v828 = vsel %vm625, %v108, 0
  %v831 = vsel %vm625, %v109, 0
  %v834 = vsel %vm625, %v110, 0
  %v837 = vsel %vm625, %v111, 0
  %v840 = vsel %vm625, %v112, 0
  %v843 = vsel %vm625, %v113, 0
  %v846 = vsel %vm625, %v114, 0
  %v849 = vsel %vm625, %v115, 0
  %v852 = vsel %vm625, %v116, 0
  %v855 = vsel %vm625, %v117, 0
  %v858 = vsel %vm625, %v118, 0
  %v861 = vsel %vm625, %v119, 0
  %v864 = vsel %vm625, %v120, 0
  %v867 = vsel %vm625, %v121, 0
  %v870 = vsel %vm625, %v122, 0
  %v873 = vsel %vm625, %v123, 0
  %v876 = vsel %vm625, %v124, 0
  %v879 = vsel %vm625, %v125, 0
  %v882 = vsel %vm625, %v126, 0
  %v885 = vsel %vm625, %v127, 0
  %v888 = vsel %vm625, %v128, 0
  %v891 = vsel %vm625, %v129, 0
  %v894 = vsel %vm625, %v130, 0
  %v897 = vsel %vm625, %v131, 0
  %v900 = vsel %vm625, %v132, 0
  %v903 = vsel %vm625, %v133, 0
  %v906 = vsel %vm625, %v134, 0
  %v909 = vsel %vm625, %v135, 0
  %v912 = vsel %vm625, %v136, 0
  %v915 = vsel %vm625, %v137, 0
  %v918 = vsel %vm625, %v138, 0
  %v921 = vsel %vm625, %v139, 0
  %v924 = vsel %vm625, %v140, 0
  %v927 = vsel %vm625, %v141, 0
  %v930 = vsel %vm625, %v142, 0
  %v933 = vsel %vm625, %v143, 0
  %v936 = vsel %vm625, %v144, 0
  %v939 = vsel %vm625, %v145, 0
  %v942 = vsel %vm625, %v146, 0
  %v945 = vsel %vm625, %v147, 0
  %v948 = vsel %vm625, %v148, 0
  %v951 = vsel %vm625, %v149, 0
  %v954 = vsel %vm625, %v150, 0
  %v957 = vsel %vm625, %v151, 0
  %v960 = vsel %vm625, %v152, 0
  %v963 = vsel %vm625, %v153, 0
  %v966 = vsel %vm625, %v154, 0
  %v969 = vsel %vm625, %v155, 0
  %v972 = vsel %vm625, %v156, 0
  %v975 = vsel %vm625, %v157, 0
  %v978 = vsel %vm625, %v158, 0
  %v981 = vsel %vm625, %v159, 0
  %v984 = vsel %vm625, %v160, 0
  %v987 = vsel %vm625, %v161, 0
  %v990 = vsel %vm625, %v162, 0
  %v993 = vsel %vm625, %v163, 0
  %v996 = vsel %vm625, %v164, 0
  %v999 = vsel %vm625, %v165, 0
  %v1002 = vsel %vm625, %v166, 0
  %v1005 = vsel %vm625, %v167, 0
  %v1008 = vsel %vm625, %v168, 0
  %v1011 = vsel %vm625, %v169, 0
  %v1014 = vsel %vm625, %v170, 0
  %v1017 = vsel %vm625, %v171, 0
  %v1020 = vsel %vm625, %v172, 0
  %v1023 = vsel %vm625, %v173, 0
  %v1026 = vsel %vm625, %v174, 0
  %v1029 = vsel %vm625, %v175, 0
  %v1032 = vsel %vm625, %v176, 0
  %v1035 = vsel %vm625, %v177, 0
  %v1038 = vsel %vm625, %v178, 0
  %v1041 = vsel %vm625, %v179, 0
  %v1044 = vsel %vm625, %v180, 0
  %v1047 = vsel %vm625, %v181, 0
  %v1050 = vsel %vm625, %v182, 0
  %v1053 = vsel %vm625, %v183, 0
  %v1056 = vsel %vm625, %v184, 0
  %v1059 = vsel %vm625, %v185, 0
  %v1062 = vsel %vm625, %v186, 0
  %v1065 = vsel %vm625, %v187, 0
  %v1068 = vsel %vm625, %v188, 0
  %v1071 = vsel %vm625, %v189, 0
  %v1074 = vsel %vm625, %v190, 0
  %v1077 = vsel %vm625, %v191, 0
  %v1080 = vsel %vm625, %v192, 0
  %v1083 = vsel %vm625, %v193, 0
  %v1086 = vsel %vm625, %v194, 0
  %v1089 = vsel %vm625, %v195, 0
  %v1092 = vsel %vm625, %v196, 0
  %v1095 = vsel %vm625, %v197, 0
  %v1098 = vsel %vm625, %v198, 0
  %v1101 = vsel %vm625, %v199, 0
  %v1104 = vsel %vm625, %v200, 0
  %v1107 = vsel %vm625, %v201, 0
  %v1110 = vsel %vm625, %v202, 0
  %v1113 = vsel %vm625, %v203, 0
  %v1116 = vsel %vm625, %v204, 0
  %v1119 = vsel %vm625, %v205, 0
  %v1122 = vsel %vm625, %v206, 0
  %v1125 = vsel %vm625, %v207, 0
  %v1128 = vsel %vm625, %v208, 0
  %v1131 = vsel %vm625, %v209, 0
  %v1134 = vsel %vm625, %v210, 0
  %v1137 = vsel %vm625, %v211, 0
  %v1140 = vsel %vm625, %v212, 0
  %v1143 = vsel %vm625, %v213, 0
  %v1146 = vsel %vm625, %v214, 0
  %v1149 = vsel %vm625, %v215, 0
  %v1152 = vsel %vm625, %v216, 0
  %v1155 = vsel %vm625, %v217, 0
  %v1158 = vsel %vm625, %v218, 0
  %v1161 = vsel %vm625, %v219, 0
  %v1164 = vsel %vm625, %v220, 0
  %v1167 = vsel %vm625, %v221, 0
  %v1170 = vsel %vm625, %v222, 0
  %v1173 = vsel %vm625, %v223, 0
  %v1176 = vsel %vm625, %v224, 0
  %v1179 = vsel %vm625, %v225, 0
  %v1182 = vsel %vm625, %v226, 0
  %v1185 = vsel %vm625, %v227, 0
  %v1188 = vsel %vm625, %v228, 0
  %v1191 = vsel %vm625, %v229, 0
  %v1194 = vsel %vm625, %v230, 0
  %v1197 = vsel %vm625, %v231, 0
  %v1200 = vsel %vm625, %v232, 0
  %v1203 = vsel %vm625, %v233, 0
  %v1206 = vsel %vm625, %v234, 0
  %v1209 = vsel %vm625, %v235, 0
  %v1212 = vsel %vm625, %v236, 0
  %v1215 = vsel %vm625, %v237, 0
  %v1218 = vsel %vm625, %v238, 0
  %v1221 = vsel %vm625, %v239, 0
  %v1224 = vsel %vm625, %v240, 0
  %v1227 = vsel %vm625, %v241, 0
  %v1230 = vsel %vm625, %v242, 0
  %v1233 = vsel %vm625, %v243, 0
  %v1236 = vsel %vm625, %v244, 0
  %v1239 = vsel %vm625, %v245, 0
  %v1242 = vsel %vm625, %v246, 0
  %v1245 = vsel %vm625, %v247, 0
  %v1248 = vsel %vm625, %v248, 0
  %v1251 = vsel %vm625, %v249, 0
  %v1254 = vsel %vm625, %v250, 0
  %v1257 = vsel %vm625, %v251, 0
  %v1260 = vsel %vm625, %v252, 0
  %v1263 = vsel %vm625, %v253, 0
  %v1266 = vsel %vm625, %v254, 0
  %v1269 = vsel %vm625, %v255, 0
  %v1272 = vsel %vm625, %v256, 0
  %v1275 = vsel %vm625, %v257, 0
  %v1278 = vsel %vm625, %v258, 0
  %v1281 = vsel %vm625, %v259, 0
  %v1284 = vsel %vm625, %v260, 0
  %v1287 = vsel %vm625, %v261, 0
  %v1290 = vsel %vm625, %v262, 0
  %v1293 = vsel %vm625, %v263, 0
  %v1296 = vsel %vm625, %v264, 0
  %v1299 = vsel %vm625, %v265, 0
  %v1302 = vsel %vm625, %v266, 0
  %v1305 = vsel %vm625, %v267, 0
  %v1308 = vsel %vm625, %v268, 0
  %v1311 = vsel %vm625, %v269, 0
  %v1314 = vsel %vm625, %v270, 0
  %v1317 = vsel %vm625, %v271, 0
  %v1320 = vsel %vm625, %v272, 0
  %v1323 = vsel %vm625, %v273, 0
  %v1326 = vsel %vm625, %v274, 0
  %v1329 = vsel %vm625, %v275, 0
  %v1332 = vsel %vm625, %v276, 0
  %v1335 = vsel %vm625, %v277, 0
  %v1338 = vsel %vm625, %v278, 0
  %v1341 = vsel %vm625, %v279, 0
  %v1344 = vsel %vm625, %v280, 0
  %v1347 = vsel %vm625, %v281, 0
  %v1350 = vsel %vm625, %v282, 0
  %v1353 = vsel %vm625, %v283, 0
  %v1356 = vsel %vm625, %v284, 0
  %v1359 = vsel %vm625, %v285, 0
  %v1362 = vsel %vm625, %v286, 0
  %v1365 = vsel %vm625, %v287, 0
  %v1368 = vsel %vm625, %v288, 0
  %v1371 = vsel %vm625, %v289, 0
  %v1374 = vsel %vm625, %v290, 0
  %v1377 = vsel %vm625, %v291, 0
  %v1380 = vsel %vm625, %v292, 0
  %v1383 = vsel %vm625, %v293, 0
  %v1386 = vsel %vm625, %v294, 0
  %v1389 = vsel %vm625, %v295, 0
  %v1392 = vsel %vm625, %v296, 0
  %v1395 = vsel %vm625, %v297, 0
  %v1398 = vsel %vm625, %v298, 0
  %v1401 = vsel %vm625, %v299, 0
  %v1404 = vsel %vm625, %v300, 0
  %v1407 = vsel %vm625, %v301, 0
  %v1410 = vsel %vm625, %v302, 0
  %v1413 = vsel %vm625, %v303, 0
  %v1416 = vsel %vm625, %v304, 0
  %v1419 = vsel %vm625, %v305, 0
  %v1422 = vsel %vm625, %v306, 0
  %v1425 = vsel %vm625, %v307, 0
  %v1428 = vsel %vm625, %v308, 0
  %v1431 = vsel %vm625, %v309, 0
  %v1434 = vsel %vm625, %v310, 0
  %v1437 = vsel %vm625, %v311, 0
  %v1440 = vsel %vm625, %v312, 0
  %v1443 = vsel %vm625, %v313, 0
  %v1446 = vsel %vm625, %v314, 0
  %v1449 = vsel %vm625, %v315, 0
  %v1452 = vsel %vm625, %v316, 0
  %v1455 = vsel %vm625, %v317, 0
  %v1458 = vsel %vm625, %v318, 0
  %v1461 = vsel %vm625, %v319, 0
  %v1464 = vsel %vm625, %v320, 0
  %v1467 = vsel %vm625, %v321, 0
  %v1470 = vsel %vm625, %v322, 0
  %v1473 = vsel %vm625, %v323, 0
  %v1476 = vsel %vm625, %v324, 0
  %v1479 = vsel %vm625, %v325, 0
  %v1482 = vsel %vm625, %v326, 0
  %v1485 = vsel %vm625, %v327, 0
  %v1488 = vsel %vm625, %v328, 0
  %v1491 = vsel %vm625, %v329, 0
  %v1494 = vsel %vm625, %v330, 0
  %v1497 = vsel %vm625, %v331, 0
  %v1500 = vsel %vm625, %v332, 0
  %v1503 = vsel %vm625, %v333, 0
  %v1506 = vsel %vm625, %v334, 0
  %v1509 = vsel %vm625, %v335, 0
  %v1512 = vsel %vm625, %v336, 0
  %v1515 = vsel %vm625, %v337, 0
  %v1518 = vsel %vm625, %v338, 0
  %v1521 = vsel %vm625, %v339, 0
  %v1524 = vsel %vm625, %v340, 0
  %v1527 = vsel %vm625, %v341, 0
  %v1530 = vsel %vm625, %v342, 0
  %v1533 = vsel %vm625, %v343, 0
  %v1536 = vsel %vm625, %v344, 0
  %v1539 = vsel %vm625, %v345, 0
  %v1542 = vsel %vm625, %v346, 0
  %v1545 = vsel %vm625, %v347, 0
  %v1548 = vsel %vm625, %v348, 0
  %v1551 = vsel %vm625, %v349, 0
  %v1554 = vsel %vm625, %v350, 0
  %v1557 = vsel %vm625, %v351, 0
  %v1560 = vsel %vm625, %v352, 0
  %v1563 = vsel %vm625, %v353, 0
  %v1566 = vsel %vm625, %v354, 0
  %v1569 = vsel %vm625, %v355, 0
  %v1572 = vsel %vm625, %v356, 0
  %v1575 = vsel %vm625, %v357, 0
  %v1578 = vsel %vm625, %v358, 0
  %v1581 = vsel %vm625, %v359, 0
  %v1584 = vsel %vm625, %v360, 0
  %v1587 = vsel %vm625, %v361, 0
  %v1590 = vsel %vm625, %v362, 0
  %v1593 = vsel %vm625, %v363, 0
  %v1596 = vsel %vm625, %v364, 0
  %v1599 = vsel %vm625, %v365, 0
  %v1602 = vsel %vm625, %v366, 0
  %v1605 = vsel %vm625, %v367, 0
  %v1608 = vsel %vm625, %v368, 0
  %v1611 = vsel %vm625, %v369, 0
  %v1614 = vsel %vm625, %v370, 0
  %v1617 = vsel %vm625, %v371, 0
  %v1620 = vsel %vm625, %v372, 0
  %v1623 = vsel %vm625, %v373, 0
  %v1626 = vsel %vm625, %v374, 0
  %v1629 = vsel %vm625, %v375, 0
  %v1632 = vsel %vm625, %v376, 0
  %v1635 = vsel %vm625, %v377, 0
  %v1638 = vsel %vm625, %v378, 0
  %v1641 = vsel %vm625, %v379, 0
  %v1644 = vsel %vm625, %v380, 0
  %v1647 = vsel %vm625, %v381, 0
  %v1650 = vsel %vm625, %v382, 0
  %v1653 = vsel %vm625, %v383, 0
  %v1656 = vsel %vm625, %v384, 0
  %v1659 = vsel %vm625, %v385, 0
  %v1662 = vsel %vm625, %v386, 0
  %v1665 = vsel %vm625, %v387, 0
  %v1668 = vsel %vm625, %v388, 0
  %v1671 = vsel %vm625, %v389, 0
  %v1674 = vsel %vm625, %v390, 0
  %v1677 = vsel %vm625, %v391, 0
  %v1680 = vsel %vm625, %v392, 0
  %v1683 = vsel %vm625, %v393, 0
  %v1686 = vsel %vm625, %v394, 0
  %v1689 = vsel %vm625, %v395, 0
  %v1692 = vsel %vm625, %v396, 0
  %v1695 = vsel %vm625, %v397, 0
  %v1698 = vsel %vm625, %v398, 0
  %v1701 = vsel %vm625, %v399, 0
  %v1704 = vsel %vm625, %v400, 0
  %v1707 = vsel %vm625, %v401, 0
  %v1710 = vsel %vm625, %v402, 0
  %v1713 = vsel %vm625, %v403, 0
  %v1716 = vsel %vm625, %v404, 0
  %v1719 = vsel %vm625, %v405, 0
  %v1722 = vsel %vm625, %v406, 0
  %v1725 = vsel %vm625, %v407, 0
  %v1728 = vsel %vm625, %v408, 0
  %v1731 = vsel %vm625, %v409, 0
  %v1734 = vsel %vm625, %v410, 0
  %v1737 = vsel %vm625, %v411, 0
  %v1740 = vsel %vm625, %v412, 0
  %v1743 = vsel %vm625, %v413, 0
  %v1746 = vsel %vm625, %v414, 0
  %v1749 = vsel %vm625, %v415, 0
  %v1752 = vsel %vm625, %v416, 0
  %v1755 = vsel %vm625, %v417, 0
  %v1758 = vsel %vm625, %v418, 0
  %v1761 = vsel %vm625, %v419, 0
  %v1764 = vsel %vm625, %v420, 0
  %v1767 = vsel %vm625, %v421, 0
  %v1770 = vsel %vm625, %v422, 0
  %v1773 = vsel %vm625, %v423, 0
  %v1776 = vsel %vm625, %v424, 0
  %v1779 = vsel %vm625, %v425, 0
  %v1782 = vsel %vm625, %v426, 0
  %v1785 = vsel %vm625, %v427, 0
  %v1788 = vsel %vm625, %v428, 0
  %v1791 = vsel %vm625, %v429, 0
  %v1794 = vsel %vm625, %v430, 0
  %v1797 = vsel %vm625, %v431, 0
  %v1800 = vsel %vm625, %v432, 0
  %v1803 = vsel %vm625, %v433, 0
  %v1806 = vsel %vm625, %v434, 0
  %v1809 = vsel %vm625, %v435, 0
  %v1812 = vsel %vm625, %v436, 0
  %v1815 = vsel %vm625, %v437, 0
  %v1818 = vsel %vm625, %v438, 0
  %v1821 = vsel %vm625, %v439, 0
  %v1824 = vsel %vm625, %v440, 0
  %v1827 = vsel %vm625, %v441, 0
  %v1830 = vsel %vm625, %v442, 0
  %v1833 = vsel %vm625, %v443, 0
  %v1836 = vsel %vm625, %v444, 0
  %v1839 = vsel %vm625, %v445, 0
  %v1842 = vsel %vm625, %v446, 0
  %v1845 = vsel %vm625, %v447, 0
  %v1848 = vsel %vm625, %v448, 0
  %v1851 = vsel %vm625, %v449, 0
  %v1854 = vsel %vm625, %v450, 0
  %v1857 = vsel %vm625, %v451, 0
  %v1860 = vsel %vm625, %v452, 0
  %v1863 = vsel %vm625, %v453, 0
  %v1866 = vsel %vm625, %v454, 0
  %v1869 = vsel %vm625, %v455, 0
  %v1872 = vsel %vm625, %v456, 0
  %v1875 = vsel %vm625, %v457, 0
  %v1878 = vsel %vm625, %v458, 0
  %v1881 = vsel %vm625, %v459, 0
  %v1884 = vsel %vm625, %v460, 0
  %v1887 = vsel %vm625, %v461, 0
  %v1890 = vsel %vm625, %v462, 0
  %v1893 = vsel %vm625, %v463, 0
  %v1896 = vsel %vm625, %v464, 0
  %v1899 = vsel %vm625, %v465, 0
  %v1902 = vsel %vm625, %v466, 0
  %v1905 = vsel %vm625, %v467, 0
  %v1908 = vsel %vm625, %v468, 0
  %v1911 = vsel %vm625, %v469, 0
  %v1914 = vsel %vm625, %v470, 0
  %v1917 = vsel %vm625, %v471, 0
  %v1920 = vsel %vm625, %v472, 0
  %v1923 = vsel %vm625, %v473, 0
  %v1926 = vsel %vm625, %v474, 0
  %v1929 = vsel %vm625, %v475, 0
  %v1932 = vsel %vm625, %v476, 0
  %v1935 = vsel %vm625, %v477, 0
  %v1938 = vsel %vm625, %v478, 0
  %v1941 = vsel %vm625, %v479, 0
  %v1944 = vsel %vm625, %v480, 0
  %v1947 = vsel %vm625, %v481, 0
  %v1950 = vsel %vm625, %v482, 0
  %v1953 = vsel %vm625, %v483, 0
  %v1956 = vsel %vm625, %v484, 0
  %v1959 = vsel %vm625, %v485, 0
  %v1962 = vsel %vm625, %v486, 0
  %v1965 = vsel %vm625, %v487, 0
  %v1968 = vsel %vm625, %v488, 0
  %v1971 = vsel %vm625, %v489, 0
  %v1974 = vsel %vm625, %v490, 0
  %v1977 = vsel %vm625, %v491, 0
  %v1980 = vsel %vm625, %v492, 0
  %v1983 = vsel %vm625, %v493, 0
  %v1986 = vsel %vm625, %v494, 0
  %v1989 = vsel %vm625, %v495, 0
  %v1992 = vsel %vm625, %v496, 0
  %v1995 = vsel %vm625, %v497, 0
  %v1998 = vsel %vm625, %v498, 0
  %v2001 = vsel %vm625, %v499, 0
  %v2004 = vsel %vm625, %v500, 0
  %v2007 = vsel %vm625, %v501, 0
  %v2010 = vsel %vm625, %v502, 0
  %v2013 = vsel %vm625, %v503, 0
  %v2016 = vsel %vm625, %v504, 0
  %v2019 = vsel %vm625, %v505, 0
  %v2022 = vsel %vm625, %v506, 0
  %v2025 = vsel %vm625, %v507, 0
  %v2028 = vsel %vm625, %v508, 0
  %v2031 = vsel %vm625, %v509, 0
  %v2034 = vsel %vm625, %v510, 0
  %v2037 = vsel %vm625, %v511, 0
  %v2040 = vsel %vm625, %v512, 0
  %v2043 = vsel %vm625, %v513, 0
  %v2046 = vsel %vm625, %v514, 0
  %v2049 = vsel %vm625, %v515, 0
  %v2052 = vsel %vm625, %v516, 0
  %v2055 = vsel %vm625, %v517, 0
  %v2058 = vsel %vm625, %v518, 0
  %v2061 = vsel %vm625, %v519, 0
  %v2064 = vsel %vm625, %v520, 0
  %v2067 = vsel %vm625, %v521, 0
  %v2070 = vsel %vm625, %v522, 0
  %v2073 = vsel %vm625, %v523, 0
  %v2076 = vsel %vm625, %v524, 0
  %v2079 = vsel %vm625, %v525, 0
  %v2082 = vsel %vm625, %v526, 0
  %v2085 = vsel %vm625, %v527, 0
  %v2088 = vsel %vm625, %v528, 0
  %v2091 = vsel %vm625, %v529, 0
  %v2094 = vsel %vm625, %v530, 0
  %v2097 = vsel %vm625, %v531, 0
  %v2100 = vsel %vm625, %v532, 0
  %v2103 = vsel %vm625, %v533, 0
  %v2106 = vsel %vm625, %v534, 0
  %v2109 = vsel %vm625, %v535, 0
  %v2112 = vsel %vm625, %v536, 0
  %v2115 = vsel %vm625, %v537, 0
  %v2118 = vsel %vm625, %v538, 0
  %v2121 = vsel %vm625, %v539, 0
  %v2124 = vsel %vm625, %v540, 0
  %v2127 = vsel %vm625, %v541, 0
  %v2130 = vsel %vm625, %v542, 0
  %v2133 = vsel %vm625, %v543, 0
  %v2136 = vsel %vm625, %v544, 0
  %v2139 = vsel %vm625, %v545, 0
  %v2142 = vsel %vm625, %v546, 0
  %v2145 = vsel %vm625, %v547, 0
  %v2148 = vsel %vm625, %v548, 0
  %v2151 = vsel %vm625, %v549, 0
  %v2154 = vsel %vm625, %v550, 0
  %v2157 = vsel %vm625, %v551, 0
  %v2160 = vsel %vm625, %v552, 0
  %v2163 = vsel %vm625, %v553, 0
  %v2166 = vsel %vm625, %v554, 0
  %v2169 = vsel %vm625, %v555, 0
  %v2172 = vsel %vm625, %v556, 0
  %v2175 = vsel %vm625, %v557, 0
  %v2178 = vsel %vm625, %v558, 0
  %v2181 = vsel %vm625, %v559, 0
  %v2184 = vsel %vm625, %v560, 0
  %v2187 = vsel %vm625, %v561, 0
  %v2190 = vsel %vm625, %v562, 0
  %v2193 = vsel %vm625, %v563, 0
  %v2196 = vsel %vm625, %v564, 0
  %v2199 = vsel %vm625, %v565, 0
  %v2202 = vsel %vm625, %v566, 0
  %v2205 = vsel %vm625, %v567, 0
  %v2208 = vsel %vm625, %v568, 0
  %v2211 = vsel %vm625, %v569, 0
  %v2214 = vsel %vm625, %v570, 0
  %v2217 = vsel %vm625, %v571, 0
  %v2220 = vsel %vm625, %v572, 0
  %v2223 = vsel %vm625, %v573, 0
  %v2226 = vsel %vm625, %v574, 0
  %v2229 = vsel %vm625, %v575, 0
  %v2232 = vsel %vm625, %v576, 0
  %v2235 = vsel %vm625, %v577, 0
  %v2238 = vsel %vm625, %v578, 0
  %v2241 = vsel %vm625, %v579, 0
  %v2244 = vsel %vm625, %v580, 0
  %v2247 = vsel %vm625, %v581, 0
  %v2250 = vsel %vm625, %v582, 0
  %v2253 = vsel %vm625, %v583, 0
  %v2256 = vsel %vm625, %v584, 0
  %v2259 = vsel %vm625, %v585, 0
  %v2262 = vsel %vm625, %v586, 0
  %v2265 = vsel %vm625, %v587, 0
  %v2268 = vsel %vm625, %v588, 0
  %v2271 = vsel %vm625, %v589, 0
  %v2274 = vsel %vm625, %v590, 0
  %v2277 = vsel %vm625, %v591, 0
  %v2280 = vsel %vm625, %v592, 0
  %v2283 = vsel %vm625, %v593, 0
  %v2286 = vsel %vm625, %v594, 0
  %v2289 = vsel %vm625, %v595, 0
  %v2292 = vsel %vm625, %v596, 0
  %v2295 = vsel %vm625, %v597, 0
  %v2298 = vsel %vm625, %v598, 0
  %v2301 = vsel %vm625, %v599, 0
  %v2304 = vsel %vm625, %v600, 0
  %v2307 = vsel %vm625, %v601, 0
  %v2310 = vsel %vm625, %v602, 0
  %v2313 = vsel %vm625, %v603, 0
  %v2316 = vsel %vm625, %v604, 0
  %v2319 = vsel %vm625, %v605, 0
  %v2322 = vsel %vm625, %v606, 0
  %v2325 = vsel %vm625, %v607, 0
  %v2328 = vsel %vm625, %v608, 0
  %v2331 = vsel %vm625, %v609, 0
  %v2334 = vsel %vm625, %v610, 0
  %v2337 = vsel %vm625, %v611, 0
  %v2340 = vsel %vm625, %v612, 0
  %v2343 = vsel %vm625, %v613, 0
  %v2346 = vsel %vm625, %v614, 0
  %v2349 = vsel %vm625, %v615, 0
  %v2352 = vsel %vm625, %v616, 0
  %2354 = vmatpush.msra.mxu0 0.0
  %2355 = vmatpush.msra.mxu0 0.0
  %2356 = vmatpush.msra.mxu0 0.0
  %2357 = vmatpush.msra.mxu0 0.0
  %2358 = vmatpush.msra.mxu0 0.0
  %2359 = vmatpush.msra.mxu0 0.0
  %2360 = vmatpush.msra.mxu0 0.0
  %2361 = vmatpush.msra.mxu0 0.0
  %2362 = vmatpush.msra.mxu0 0.0
  %2363 = vmatpush.msra.mxu0 0.0
  %2364 = vmatpush.msra.mxu0 0.0
  %2365 = vmatpush.msra.mxu0 0.0
  %2366 = vmatpush.msra.mxu0 %v620
  %2367 = vmatpush.msra.mxu0 %v619
  %2368 = vmatpush.msra.mxu0 %v618
  %2369 = vmatpush.msra.mxu0 %v617
  %2370 = vmatmul.f32.gmra.mxu0 %v627
  %v2371 = vpop.f32.mrf.mxu0
  %v2372 = vadd.f32 %v623, %v2371
  %2373 = vmatmul.f32.gmra.mxu0 %v630
  %v2374 = vpop.f32.mrf.mxu0
  %v2375 = vadd.f32 %v623, %v2374
  %2376 = vmatmul.f32.gmra.mxu0 %v633
  %v2377 = vpop.f32.mrf.mxu0
  %v2378 = vadd.f32 %v623, %v2377
  %2379 = vmatmul.f32.gmra.mxu0 %v636
  %v2380 = vpop.f32.mrf.mxu0
  %v2381 = vadd.f32 %v623, %v2380
  %2382 = vmatmul.f32.gmra.mxu0 %v639
  %v2383 = vpop.f32.mrf.mxu0
  %v2384 = vadd.f32 %v623, %v2383
  %2385 = vmatmul.f32.gmra.mxu0 %v642
  %v2386 = vpop.f32.mrf.mxu0
  %v2387 = vadd.f32 %v623, %v2386
  %2388 = vmatmul.f32.gmra.mxu0 %v645
  %v2389 = vpop.f32.mrf.mxu0
  %v2390 = vadd.f32 %v623, %v2389
  %2391 = vmatmul.f32.gmra.mxu0 %v648
  %v2392 = vpop.f32.mrf.mxu0
  %v2393 = vadd.f32 %v623, %v2392
  %2394 = vmatmul.f32.gmra.mxu0 %v651
  %v2395 = vpop.f32.mrf.mxu0
  %v2396 = vadd.f32 %v623, %v2395
  %2397 = vmatmul.f32.gmra.mxu0 %v654
  %v2398 = vpop.f32.mrf.mxu0
  %v2399 = vadd.f32 %v623, %v2398
  %2400 = vmatmul.f32.gmra.mxu0 %v657
  %v2401 = vpop.f32.mrf.mxu0
  %v2402 = vadd.f32 %v623, %v2401
  %2403 = vmatmul.f32.gmra.mxu0 %v660
  %v2404 = vpop.f32.mrf.mxu0
  %v2405 = vadd.f32 %v623, %v2404
  %2406 = vmatmul.f32.gmra.mxu0 %v663
  %v2407 = vpop.f32.mrf.mxu0
  %v2408 = vadd.f32 %v623, %v2407
  %2409 = vmatmul.f32.gmra.mxu0 %v666
  %v2410 = vpop.f32.mrf.mxu0
  %v2411 = vadd.f32 %v623, %v2410
  %2412 = vmatmul.f32.gmra.mxu0 %v669
  %v2413 = vpop.f32.mrf.mxu0
  %v2414 = vadd.f32 %v623, %v2413
  %2415 = vmatmul.f32.gmra.mxu0 %v672
  %v2416 = vpop.f32.mrf.mxu0
  %v2417 = vadd.f32 %v623, %v2416
  %2418 = vmatmul.f32.gmra.mxu0 %v675
  %v2419 = vpop.f32.mrf.mxu0
  %v2420 = vadd.f32 %v623, %v2419
  %2421 = vmatmul.f32.gmra.mxu0 %v678
  %v2422 = vpop.f32.mrf.mxu0
  %v2423 = vadd.f32 %v623, %v2422
  %2424 = vmatmul.f32.gmra.mxu0 %v681
  %v2425 = vpop.f32.mrf.mxu0
  %v2426 = vadd.f32 %v623, %v2425
  %2427 = vmatmul.f32.gmra.mxu0 %v684
  %v2428 = vpop.f32.mrf.mxu0
  %v2429 = vadd.f32 %v623, %v2428
  %2430 = vmatmul.f32.gmra.mxu0 %v687
  %v2431 = vpop.f32.mrf.mxu0
  %v2432 = vadd.f32 %v623, %v2431
  %2433 = vmatmul.f32.gmra.mxu0 %v690
  %v2434 = vpop.f32.mrf.mxu0
  %v2435 = vadd.f32 %v623, %v2434
  %2436 = vmatmul.f32.gmra.mxu0 %v693
  %v2437 = vpop.f32.mrf.mxu0
  %v2438 = vadd.f32 %v623, %v2437
  %2439 = vmatmul.f32.gmra.mxu0 %v696
  %v2440 = vpop.f32.mrf.mxu0
  %v2441 = vadd.f32 %v623, %v2440
  %2442 = vmatmul.f32.gmra.mxu0 %v699
  %v2443 = vpop.f32.mrf.mxu0
  %v2444 = vadd.f32 %v623, %v2443
  %2445 = vmatmul.f32.gmra.mxu0 %v702
  %v2446 = vpop.f32.mrf.mxu0
  %v2447 = vadd.f32 %v623, %v2446
  %2448 = vmatmul.f32.gmra.mxu0 %v705
  %v2449 = vpop.f32.mrf.mxu0
  %v2450 = vadd.f32 %v623, %v2449
  %2451 = vmatmul.f32.gmra.mxu0 %v708
  %v2452 = vpop.f32.mrf.mxu0
  %v2453 = vadd.f32 %v623, %v2452
  %2454 = vmatmul.f32.gmra.mxu0 %v711
  %v2455 = vpop.f32.mrf.mxu0
  %v2456 = vadd.f32 %v623, %v2455
  %2457 = vmatmul.f32.gmra.mxu0 %v714
  %v2458 = vpop.f32.mrf.mxu0
  %v2459 = vadd.f32 %v623, %v2458
  %2460 = vmatmul.f32.gmra.mxu0 %v717
  %v2461 = vpop.f32.mrf.mxu0
  %v2462 = vadd.f32 %v623, %v2461
  %2463 = vmatmul.f32.gmra.mxu0 %v720
  %v2464 = vpop.f32.mrf.mxu0
  %v2465 = vadd.f32 %v623, %v2464
  %2466 = vmatmul.f32.gmra.mxu0 %v723
  %v2467 = vpop.f32.mrf.mxu0
  %v2468 = vadd.f32 %v623, %v2467
  %2469 = vmatmul.f32.gmra.mxu0 %v726
  %v2470 = vpop.f32.mrf.mxu0
  %v2471 = vadd.f32 %v623, %v2470
  %2472 = vmatmul.f32.gmra.mxu0 %v729
  %v2473 = vpop.f32.mrf.mxu0
  %v2474 = vadd.f32 %v623, %v2473
  %2475 = vmatmul.f32.gmra.mxu0 %v732
  %v2476 = vpop.f32.mrf.mxu0
  %v2477 = vadd.f32 %v623, %v2476
  %2478 = vmatmul.f32.gmra.mxu0 %v735
  %v2479 = vpop.f32.mrf.mxu0
  %v2480 = vadd.f32 %v623, %v2479
  %2481 = vmatmul.f32.gmra.mxu0 %v738
  %v2482 = vpop.f32.mrf.mxu0
  %v2483 = vadd.f32 %v623, %v2482
  %2484 = vmatmul.f32.gmra.mxu0 %v741
  %v2485 = vpop.f32.mrf.mxu0
  %v2486 = vadd.f32 %v623, %v2485
  %2487 = vmatmul.f32.gmra.mxu0 %v744
  %v2488 = vpop.f32.mrf.mxu0
  %v2489 = vadd.f32 %v623, %v2488
  %2490 = vmatmul.f32.gmra.mxu0 %v747
  %v2491 = vpop.f32.mrf.mxu0
  %v2492 = vadd.f32 %v623, %v2491
  %2493 = vmatmul.f32.gmra.mxu0 %v750
  %v2494 = vpop.f32.mrf.mxu0
  %v2495 = vadd.f32 %v623, %v2494
  %2496 = vmatmul.f32.gmra.mxu0 %v753
  %v2497 = vpop.f32.mrf.mxu0
  %v2498 = vadd.f32 %v623, %v2497
  %2499 = vmatmul.f32.gmra.mxu0 %v756
  %v2500 = vpop.f32.mrf.mxu0
  %v2501 = vadd.f32 %v623, %v2500
  %2502 = vmatmul.f32.gmra.mxu0 %v759
  %v2503 = vpop.f32.mrf.mxu0
  %v2504 = vadd.f32 %v623, %v2503
  %2505 = vmatmul.f32.gmra.mxu0 %v762
  %v2506 = vpop.f32.mrf.mxu0
  %v2507 = vadd.f32 %v623, %v2506
  %2508 = vmatmul.f32.gmra.mxu0 %v765
  %v2509 = vpop.f32.mrf.mxu0
  %v2510 = vadd.f32 %v623, %v2509
  %2511 = vmatmul.f32.gmra.mxu0 %v768
  %v2512 = vpop.f32.mrf.mxu0
  %v2513 = vadd.f32 %v623, %v2512
  %2514 = vmatmul.f32.gmra.mxu0 %v771
  %v2515 = vpop.f32.mrf.mxu0
  %v2516 = vadd.f32 %v623, %v2515
  %2517 = vmatmul.f32.gmra.mxu0 %v774
  %v2518 = vpop.f32.mrf.mxu0
  %v2519 = vadd.f32 %v623, %v2518
  %2520 = vmatmul.f32.gmra.mxu0 %v777
  %v2521 = vpop.f32.mrf.mxu0
  %v2522 = vadd.f32 %v623, %v2521
  %2523 = vmatmul.f32.gmra.mxu0 %v780
  %v2524 = vpop.f32.mrf.mxu0
  %v2525 = vadd.f32 %v623, %v2524
  %2526 = vmatmul.f32.gmra.mxu0 %v783
  %v2527 = vpop.f32.mrf.mxu0
  %v2528 = vadd.f32 %v623, %v2527
  %2529 = vmatmul.f32.gmra.mxu0 %v786
  %v2530 = vpop.f32.mrf.mxu0
  %v2531 = vadd.f32 %v623, %v2530
  %2532 = vmatmul.f32.gmra.mxu0 %v789
  %v2533 = vpop.f32.mrf.mxu0
  %v2534 = vadd.f32 %v623, %v2533
  %2535 = vmatmul.f32.gmra.mxu0 %v792
  %v2536 = vpop.f32.mrf.mxu0
  %v2537 = vadd.f32 %v623, %v2536
  %2538 = vmatmul.f32.gmra.mxu0 %v795
  %v2539 = vpop.f32.mrf.mxu0
  %v2540 = vadd.f32 %v623, %v2539
  %2541 = vmatmul.f32.gmra.mxu0 %v798
  %v2542 = vpop.f32.mrf.mxu0
  %v2543 = vadd.f32 %v623, %v2542
  %2544 = vmatmul.f32.gmra.mxu0 %v801
  %v2545 = vpop.f32.mrf.mxu0
  %v2546 = vadd.f32 %v623, %v2545
  %2547 = vmatmul.f32.gmra.mxu0 %v804
  %v2548 = vpop.f32.mrf.mxu0
  %v2549 = vadd.f32 %v623, %v2548
  %2550 = vmatmul.f32.gmra.mxu0 %v807
  %v2551 = vpop.f32.mrf.mxu0
  %v2552 = vadd.f32 %v623, %v2551
  %2553 = vmatmul.f32.gmra.mxu0 %v810
  %v2554 = vpop.f32.mrf.mxu0
  %v2555 = vadd.f32 %v623, %v2554
  %2556 = vmatmul.f32.gmra.mxu0 %v813
  %v2557 = vpop.f32.mrf.mxu0
  %v2558 = vadd.f32 %v623, %v2557
  %2559 = vmatmul.f32.gmra.mxu0 %v816
  %v2560 = vpop.f32.mrf.mxu0
  %v2561 = vadd.f32 %v623, %v2560
  %2562 = vmatmul.f32.gmra.mxu0 %v819
  %v2563 = vpop.f32.mrf.mxu0
  %v2564 = vadd.f32 %v623, %v2563
  %2565 = vmatmul.f32.gmra.mxu0 %v822
  %v2566 = vpop.f32.mrf.mxu0
  %v2567 = vadd.f32 %v623, %v2566
  %2568 = vmatmul.f32.gmra.mxu0 %v825
  %v2569 = vpop.f32.mrf.mxu0
  %v2570 = vadd.f32 %v623, %v2569
  %2571 = vmatmul.f32.gmra.mxu0 %v828
  %v2572 = vpop.f32.mrf.mxu0
  %v2573 = vadd.f32 %v623, %v2572
  %2574 = vmatmul.f32.gmra.mxu0 %v831
  %v2575 = vpop.f32.mrf.mxu0
  %v2576 = vadd.f32 %v623, %v2575
  %2577 = vmatmul.f32.gmra.mxu0 %v834
  %v2578 = vpop.f32.mrf.mxu0
  %v2579 = vadd.f32 %v623, %v2578
  %2580 = vmatmul.f32.gmra.mxu0 %v837
  %v2581 = vpop.f32.mrf.mxu0
  %v2582 = vadd.f32 %v623, %v2581
  %2583 = vmatmul.f32.gmra.mxu0 %v840
  %v2584 = vpop.f32.mrf.mxu0
  %v2585 = vadd.f32 %v623, %v2584
  %2586 = vmatmul.f32.gmra.mxu0 %v843
  %v2587 = vpop.f32.mrf.mxu0
  %v2588 = vadd.f32 %v623, %v2587
  %2589 = vmatmul.f32.gmra.mxu0 %v846
  %v2590 = vpop.f32.mrf.mxu0
  %v2591 = vadd.f32 %v623, %v2590
  %2592 = vmatmul.f32.gmra.mxu0 %v849
  %v2593 = vpop.f32.mrf.mxu0
  %v2594 = vadd.f32 %v623, %v2593
  %2595 = vmatmul.f32.gmra.mxu0 %v852
  %v2596 = vpop.f32.mrf.mxu0
  %v2597 = vadd.f32 %v623, %v2596
  %2598 = vmatmul.f32.gmra.mxu0 %v855
  %v2599 = vpop.f32.mrf.mxu0
  %v2600 = vadd.f32 %v623, %v2599
  %2601 = vmatmul.f32.gmra.mxu0 %v858
  %v2602 = vpop.f32.mrf.mxu0
  %v2603 = vadd.f32 %v623, %v2602
  %2604 = vmatmul.f32.gmra.mxu0 %v861
  %v2605 = vpop.f32.mrf.mxu0
  %v2606 = vadd.f32 %v623, %v2605
  %2607 = vmatmul.f32.gmra.mxu0 %v864
  %v2608 = vpop.f32.mrf.mxu0
  %v2609 = vadd.f32 %v623, %v2608
  %2610 = vmatmul.f32.gmra.mxu0 %v867
  %v2611 = vpop.f32.mrf.mxu0
  %v2612 = vadd.f32 %v623, %v2611
  %2613 = vmatmul.f32.gmra.mxu0 %v870
  %v2614 = vpop.f32.mrf.mxu0
  %v2615 = vadd.f32 %v623, %v2614
  %2616 = vmatmul.f32.gmra.mxu0 %v873
  %v2617 = vpop.f32.mrf.mxu0
  %v2618 = vadd.f32 %v623, %v2617
  %2619 = vmatmul.f32.gmra.mxu0 %v876
  %v2620 = vpop.f32.mrf.mxu0
  %v2621 = vadd.f32 %v623, %v2620
  %2622 = vmatmul.f32.gmra.mxu0 %v879
  %v2623 = vpop.f32.mrf.mxu0
  %v2624 = vadd.f32 %v623, %v2623
  %2625 = vmatmul.f32.gmra.mxu0 %v882
  %v2626 = vpop.f32.mrf.mxu0
  %v2627 = vadd.f32 %v623, %v2626
  %2628 = vmatmul.f32.gmra.mxu0 %v885
  %v2629 = vpop.f32.mrf.mxu0
  %v2630 = vadd.f32 %v623, %v2629
  %2631 = vmatmul.f32.gmra.mxu0 %v888
  %v2632 = vpop.f32.mrf.mxu0
  %v2633 = vadd.f32 %v623, %v2632
  %2634 = vmatmul.f32.gmra.mxu0 %v891
  %v2635 = vpop.f32.mrf.mxu0
  %v2636 = vadd.f32 %v623, %v2635
  %2637 = vmatmul.f32.gmra.mxu0 %v894
  %v2638 = vpop.f32.mrf.mxu0
  %v2639 = vadd.f32 %v623, %v2638
  %2640 = vmatmul.f32.gmra.mxu0 %v897
  %v2641 = vpop.f32.mrf.mxu0
  %v2642 = vadd.f32 %v623, %v2641
  %2643 = vmatmul.f32.gmra.mxu0 %v900
  %v2644 = vpop.f32.mrf.mxu0
  %v2645 = vadd.f32 %v623, %v2644
  %2646 = vmatmul.f32.gmra.mxu0 %v903
  %v2647 = vpop.f32.mrf.mxu0
  %v2648 = vadd.f32 %v623, %v2647
  %2649 = vmatmul.f32.gmra.mxu0 %v906
  %v2650 = vpop.f32.mrf.mxu0
  %v2651 = vadd.f32 %v623, %v2650
  %2652 = vmatmul.f32.gmra.mxu0 %v909
  %v2653 = vpop.f32.mrf.mxu0
  %v2654 = vadd.f32 %v623, %v2653
  %2655 = vmatmul.f32.gmra.mxu0 %v912
  %v2656 = vpop.f32.mrf.mxu0
  %v2657 = vadd.f32 %v623, %v2656
  %2658 = vmatmul.f32.gmra.mxu0 %v915
  %v2659 = vpop.f32.mrf.mxu0
  %v2660 = vadd.f32 %v623, %v2659
  %2661 = vmatmul.f32.gmra.mxu0 %v918
  %v2662 = vpop.f32.mrf.mxu0
  %v2663 = vadd.f32 %v623, %v2662
  %2664 = vmatmul.f32.gmra.mxu0 %v921
  %v2665 = vpop.f32.mrf.mxu0
  %v2666 = vadd.f32 %v623, %v2665
  %2667 = vmatmul.f32.gmra.mxu0 %v924
  %v2668 = vpop.f32.mrf.mxu0
  %v2669 = vadd.f32 %v623, %v2668
  %2670 = vmatmul.f32.gmra.mxu0 %v927
  %v2671 = vpop.f32.mrf.mxu0
  %v2672 = vadd.f32 %v623, %v2671
  %2673 = vmatmul.f32.gmra.mxu0 %v930
  %v2674 = vpop.f32.mrf.mxu0
  %v2675 = vadd.f32 %v623, %v2674
  %2676 = vmatmul.f32.gmra.mxu0 %v933
  %v2677 = vpop.f32.mrf.mxu0
  %v2678 = vadd.f32 %v623, %v2677
  %2679 = vmatmul.f32.gmra.mxu0 %v936
  %v2680 = vpop.f32.mrf.mxu0
  %v2681 = vadd.f32 %v623, %v2680
  %2682 = vmatmul.f32.gmra.mxu0 %v939
  %v2683 = vpop.f32.mrf.mxu0
  %v2684 = vadd.f32 %v623, %v2683
  %2685 = vmatmul.f32.gmra.mxu0 %v942
  %v2686 = vpop.f32.mrf.mxu0
  %v2687 = vadd.f32 %v623, %v2686
  %2688 = vmatmul.f32.gmra.mxu0 %v945
  %v2689 = vpop.f32.mrf.mxu0
  %v2690 = vadd.f32 %v623, %v2689
  %2691 = vmatmul.f32.gmra.mxu0 %v948
  %v2692 = vpop.f32.mrf.mxu0
  %v2693 = vadd.f32 %v623, %v2692
  %2694 = vmatmul.f32.gmra.mxu0 %v951
  %v2695 = vpop.f32.mrf.mxu0
  %v2696 = vadd.f32 %v623, %v2695
  %2697 = vmatmul.f32.gmra.mxu0 %v954
  %v2698 = vpop.f32.mrf.mxu0
  %v2699 = vadd.f32 %v623, %v2698
  %2700 = vmatmul.f32.gmra.mxu0 %v957
  %v2701 = vpop.f32.mrf.mxu0
  %v2702 = vadd.f32 %v623, %v2701
  %2703 = vmatmul.f32.gmra.mxu0 %v960
  %v2704 = vpop.f32.mrf.mxu0
  %v2705 = vadd.f32 %v623, %v2704
  %2706 = vmatmul.f32.gmra.mxu0 %v963
  %v2707 = vpop.f32.mrf.mxu0
  %v2708 = vadd.f32 %v623, %v2707
  %2709 = vmatmul.f32.gmra.mxu0 %v966
  %v2710 = vpop.f32.mrf.mxu0
  %v2711 = vadd.f32 %v623, %v2710
  %2712 = vmatmul.f32.gmra.mxu0 %v969
  %v2713 = vpop.f32.mrf.mxu0
  %v2714 = vadd.f32 %v623, %v2713
  %2715 = vmatmul.f32.gmra.mxu0 %v972
  %v2716 = vpop.f32.mrf.mxu0
  %v2717 = vadd.f32 %v623, %v2716
  %2718 = vmatmul.f32.gmra.mxu0 %v975
  %v2719 = vpop.f32.mrf.mxu0
  %v2720 = vadd.f32 %v623, %v2719
  %2721 = vmatmul.f32.gmra.mxu0 %v978
  %v2722 = vpop.f32.mrf.mxu0
  %v2723 = vadd.f32 %v623, %v2722
  %2724 = vmatmul.f32.gmra.mxu0 %v981
  %v2725 = vpop.f32.mrf.mxu0
  %v2726 = vadd.f32 %v623, %v2725
  %2727 = vmatmul.f32.gmra.mxu0 %v984
  %v2728 = vpop.f32.mrf.mxu0
  %v2729 = vadd.f32 %v623, %v2728
  %2730 = vmatmul.f32.gmra.mxu0 %v987
  %v2731 = vpop.f32.mrf.mxu0
  %v2732 = vadd.f32 %v623, %v2731
  %2733 = vmatmul.f32.gmra.mxu0 %v990
  %v2734 = vpop.f32.mrf.mxu0
  %v2735 = vadd.f32 %v623, %v2734
  %2736 = vmatmul.f32.gmra.mxu0 %v993
  %v2737 = vpop.f32.mrf.mxu0
  %v2738 = vadd.f32 %v623, %v2737
  %2739 = vmatmul.f32.gmra.mxu0 %v996
  %v2740 = vpop.f32.mrf.mxu0
  %v2741 = vadd.f32 %v623, %v2740
  %2742 = vmatmul.f32.gmra.mxu0 %v999
  %v2743 = vpop.f32.mrf.mxu0
  %v2744 = vadd.f32 %v623, %v2743
  %2745 = vmatmul.f32.gmra.mxu0 %v1002
  %v2746 = vpop.f32.mrf.mxu0
  %v2747 = vadd.f32 %v623, %v2746
  %2748 = vmatmul.f32.gmra.mxu0 %v1005
  %v2749 = vpop.f32.mrf.mxu0
  %v2750 = vadd.f32 %v623, %v2749
  %2751 = vmatmul.f32.gmra.mxu0 %v1008
  %v2752 = vpop.f32.mrf.mxu0
  %v2753 = vadd.f32 %v623, %v2752
  %2754 = vmatmul.f32.gmra.mxu0 %v1011
  %v2755 = vpop.f32.mrf.mxu0
  %v2756 = vadd.f32 %v623, %v2755
  %2757 = vmatmul.f32.gmra.mxu0 %v1014
  %v2758 = vpop.f32.mrf.mxu0
  %v2759 = vadd.f32 %v623, %v2758
  %2760 = vmatmul.f32.gmra.mxu0 %v1017
  %v2761 = vpop.f32.mrf.mxu0
  %v2762 = vadd.f32 %v623, %v2761
  %2763 = vmatmul.f32.gmra.mxu0 %v1020
  %v2764 = vpop.f32.mrf.mxu0
  %v2765 = vadd.f32 %v623, %v2764
  %2766 = vmatmul.f32.gmra.mxu0 %v1023
  %v2767 = vpop.f32.mrf.mxu0
  %v2768 = vadd.f32 %v623, %v2767
  %2769 = vmatmul.f32.gmra.mxu0 %v1026
  %v2770 = vpop.f32.mrf.mxu0
  %v2771 = vadd.f32 %v623, %v2770
  %2772 = vmatmul.f32.gmra.mxu0 %v1029
  %v2773 = vpop.f32.mrf.mxu0
  %v2774 = vadd.f32 %v623, %v2773
  %2775 = vmatmul.f32.gmra.mxu0 %v1032
  %v2776 = vpop.f32.mrf.mxu0
  %v2777 = vadd.f32 %v623, %v2776
  %2778 = vmatmul.f32.gmra.mxu0 %v1035
  %v2779 = vpop.f32.mrf.mxu0
  %v2780 = vadd.f32 %v623, %v2779
  %2781 = vmatmul.f32.gmra.mxu0 %v1038
  %v2782 = vpop.f32.mrf.mxu0
  %v2783 = vadd.f32 %v623, %v2782
  %2784 = vmatmul.f32.gmra.mxu0 %v1041
  %v2785 = vpop.f32.mrf.mxu0
  %v2786 = vadd.f32 %v623, %v2785
  %2787 = vmatmul.f32.gmra.mxu0 %v1044
  %v2788 = vpop.f32.mrf.mxu0
  %v2789 = vadd.f32 %v623, %v2788
  %2790 = vmatmul.f32.gmra.mxu0 %v1047
  %v2791 = vpop.f32.mrf.mxu0
  %v2792 = vadd.f32 %v623, %v2791
  %2793 = vmatmul.f32.gmra.mxu0 %v1050
  %v2794 = vpop.f32.mrf.mxu0
  %v2795 = vadd.f32 %v623, %v2794
  %2796 = vmatmul.f32.gmra.mxu0 %v1053
  %v2797 = vpop.f32.mrf.mxu0
  %v2798 = vadd.f32 %v623, %v2797
  %2799 = vmatmul.f32.gmra.mxu0 %v1056
  %v2800 = vpop.f32.mrf.mxu0
  %v2801 = vadd.f32 %v623, %v2800
  %2802 = vmatmul.f32.gmra.mxu0 %v1059
  %v2803 = vpop.f32.mrf.mxu0
  %v2804 = vadd.f32 %v623, %v2803
  %2805 = vmatmul.f32.gmra.mxu0 %v1062
  %v2806 = vpop.f32.mrf.mxu0
  %v2807 = vadd.f32 %v623, %v2806
  %2808 = vmatmul.f32.gmra.mxu0 %v1065
  %v2809 = vpop.f32.mrf.mxu0
  %v2810 = vadd.f32 %v623, %v2809
  %2811 = vmatmul.f32.gmra.mxu0 %v1068
  %v2812 = vpop.f32.mrf.mxu0
  %v2813 = vadd.f32 %v623, %v2812
  %2814 = vmatmul.f32.gmra.mxu0 %v1071
  %v2815 = vpop.f32.mrf.mxu0
  %v2816 = vadd.f32 %v623, %v2815
  %2817 = vmatmul.f32.gmra.mxu0 %v1074
  %v2818 = vpop.f32.mrf.mxu0
  %v2819 = vadd.f32 %v623, %v2818
  %2820 = vmatmul.f32.gmra.mxu0 %v1077
  %v2821 = vpop.f32.mrf.mxu0
  %v2822 = vadd.f32 %v623, %v2821
  %2823 = vmatmul.f32.gmra.mxu0 %v1080
  %v2824 = vpop.f32.mrf.mxu0
  %v2825 = vadd.f32 %v623, %v2824
  %2826 = vmatmul.f32.gmra.mxu0 %v1083
  %v2827 = vpop.f32.mrf.mxu0
  %v2828 = vadd.f32 %v623, %v2827
  %2829 = vmatmul.f32.gmra.mxu0 %v1086
  %v2830 = vpop.f32.mrf.mxu0
  %v2831 = vadd.f32 %v623, %v2830
  %2832 = vmatmul.f32.gmra.mxu0 %v1089
  %v2833 = vpop.f32.mrf.mxu0
  %v2834 = vadd.f32 %v623, %v2833
  %2835 = vmatmul.f32.gmra.mxu0 %v1092
  %v2836 = vpop.f32.mrf.mxu0
  %v2837 = vadd.f32 %v623, %v2836
  %2838 = vmatmul.f32.gmra.mxu0 %v1095
  %v2839 = vpop.f32.mrf.mxu0
  %v2840 = vadd.f32 %v623, %v2839
  %2841 = vmatmul.f32.gmra.mxu0 %v1098
  %v2842 = vpop.f32.mrf.mxu0
  %v2843 = vadd.f32 %v623, %v2842
  %2844 = vmatmul.f32.gmra.mxu0 %v1101
  %v2845 = vpop.f32.mrf.mxu0
  %v2846 = vadd.f32 %v623, %v2845
  %2847 = vmatmul.f32.gmra.mxu0 %v1104
  %v2848 = vpop.f32.mrf.mxu0
  %v2849 = vadd.f32 %v623, %v2848
  %2850 = vmatmul.f32.gmra.mxu0 %v1107
  %v2851 = vpop.f32.mrf.mxu0
  %v2852 = vadd.f32 %v623, %v2851
  %2853 = vmatmul.f32.gmra.mxu0 %v1110
  %v2854 = vpop.f32.mrf.mxu0
  %v2855 = vadd.f32 %v623, %v2854
  %2856 = vmatmul.f32.gmra.mxu0 %v1113
  %v2857 = vpop.f32.mrf.mxu0
  %v2858 = vadd.f32 %v623, %v2857
  %2859 = vmatmul.f32.gmra.mxu0 %v1116
  %v2860 = vpop.f32.mrf.mxu0
  %v2861 = vadd.f32 %v623, %v2860
  %2862 = vmatmul.f32.gmra.mxu0 %v1119
  %v2863 = vpop.f32.mrf.mxu0
  %v2864 = vadd.f32 %v623, %v2863
  %2865 = vmatmul.f32.gmra.mxu0 %v1122
  %v2866 = vpop.f32.mrf.mxu0
  %v2867 = vadd.f32 %v623, %v2866
  %2868 = vmatmul.f32.gmra.mxu0 %v1125
  %v2869 = vpop.f32.mrf.mxu0
  %v2870 = vadd.f32 %v623, %v2869
  %2871 = vmatmul.f32.gmra.mxu0 %v1128
  %v2872 = vpop.f32.mrf.mxu0
  %v2873 = vadd.f32 %v623, %v2872
  %2874 = vmatmul.f32.gmra.mxu0 %v1131
  %v2875 = vpop.f32.mrf.mxu0
  %v2876 = vadd.f32 %v623, %v2875
  %2877 = vmatmul.f32.gmra.mxu0 %v1134
  %v2878 = vpop.f32.mrf.mxu0
  %v2879 = vadd.f32 %v623, %v2878
  %2880 = vmatmul.f32.gmra.mxu0 %v1137
  %v2881 = vpop.f32.mrf.mxu0
  %v2882 = vadd.f32 %v623, %v2881
  %2883 = vmatmul.f32.gmra.mxu0 %v1140
  %v2884 = vpop.f32.mrf.mxu0
  %v2885 = vadd.f32 %v623, %v2884
  %2886 = vmatmul.f32.gmra.mxu0 %v1143
  %v2887 = vpop.f32.mrf.mxu0
  %v2888 = vadd.f32 %v623, %v2887
  %2889 = vmatmul.f32.gmra.mxu0 %v1146
  %v2890 = vpop.f32.mrf.mxu0
  %v2891 = vadd.f32 %v623, %v2890
  %2892 = vmatmul.f32.gmra.mxu0 %v1149
  %v2893 = vpop.f32.mrf.mxu0
  %v2894 = vadd.f32 %v623, %v2893
  %2895 = vmatmul.f32.gmra.mxu0 %v1152
  %v2896 = vpop.f32.mrf.mxu0
  %v2897 = vadd.f32 %v623, %v2896
  %2898 = vmatmul.f32.gmra.mxu0 %v1155
  %v2899 = vpop.f32.mrf.mxu0
  %v2900 = vadd.f32 %v623, %v2899
  %2901 = vmatmul.f32.gmra.mxu0 %v1158
  %v2902 = vpop.f32.mrf.mxu0
  %v2903 = vadd.f32 %v623, %v2902
  %2904 = vmatmul.f32.gmra.mxu0 %v1161
  %v2905 = vpop.f32.mrf.mxu0
  %v2906 = vadd.f32 %v623, %v2905
  %2907 = vmatmul.f32.gmra.mxu0 %v1164
  %v2908 = vpop.f32.mrf.mxu0
  %v2909 = vadd.f32 %v623, %v2908
  %2910 = vmatmul.f32.gmra.mxu0 %v1167
  %v2911 = vpop.f32.mrf.mxu0
  %v2912 = vadd.f32 %v623, %v2911
  %2913 = vmatmul.f32.gmra.mxu0 %v1170
  %v2914 = vpop.f32.mrf.mxu0
  %v2915 = vadd.f32 %v623, %v2914
  %2916 = vmatmul.f32.gmra.mxu0 %v1173
  %v2917 = vpop.f32.mrf.mxu0
  %v2918 = vadd.f32 %v623, %v2917
  %2919 = vmatmul.f32.gmra.mxu0 %v1176
  %v2920 = vpop.f32.mrf.mxu0
  %v2921 = vadd.f32 %v623, %v2920
  %2922 = vmatmul.f32.gmra.mxu0 %v1179
  %v2923 = vpop.f32.mrf.mxu0
  %v2924 = vadd.f32 %v623, %v2923
  %2925 = vmatmul.f32.gmra.mxu0 %v1182
  %v2926 = vpop.f32.mrf.mxu0
  %v2927 = vadd.f32 %v623, %v2926
  %2928 = vmatmul.f32.gmra.mxu0 %v1185
  %v2929 = vpop.f32.mrf.mxu0
  %v2930 = vadd.f32 %v623, %v2929
  %2931 = vmatmul.f32.gmra.mxu0 %v1188
  %v2932 = vpop.f32.mrf.mxu0
  %v2933 = vadd.f32 %v623, %v2932
  %2934 = vmatmul.f32.gmra.mxu0 %v1191
  %v2935 = vpop.f32.mrf.mxu0
  %v2936 = vadd.f32 %v623, %v2935
  %2937 = vmatmul.f32.gmra.mxu0 %v1194
  %v2938 = vpop.f32.mrf.mxu0
  %v2939 = vadd.f32 %v623, %v2938
  %2940 = vmatmul.f32.gmra.mxu0 %v1197
  %v2941 = vpop.f32.mrf.mxu0
  %v2942 = vadd.f32 %v623, %v2941
  %2943 = vmatmul.f32.gmra.mxu0 %v1200
  %v2944 = vpop.f32.mrf.mxu0
  %v2945 = vadd.f32 %v623, %v2944
  %2946 = vmatmul.f32.gmra.mxu0 %v1203
  %v2947 = vpop.f32.mrf.mxu0
  %v2948 = vadd.f32 %v623, %v2947
  %2949 = vmatmul.f32.gmra.mxu0 %v1206
  %v2950 = vpop.f32.mrf.mxu0
  %v2951 = vadd.f32 %v623, %v2950
  %2952 = vmatmul.f32.gmra.mxu0 %v1209
  %v2953 = vpop.f32.mrf.mxu0
  %v2954 = vadd.f32 %v623, %v2953
  %2955 = vmatmul.f32.gmra.mxu0 %v1212
  %v2956 = vpop.f32.mrf.mxu0
  %v2957 = vadd.f32 %v623, %v2956
  %2958 = vmatmul.f32.gmra.mxu0 %v1215
  %v2959 = vpop.f32.mrf.mxu0
  %v2960 = vadd.f32 %v623, %v2959
  %2961 = vmatmul.f32.gmra.mxu0 %v1218
  %v2962 = vpop.f32.mrf.mxu0
  %v2963 = vadd.f32 %v623, %v2962
  %2964 = vmatmul.f32.gmra.mxu0 %v1221
  %v2965 = vpop.f32.mrf.mxu0
  %v2966 = vadd.f32 %v623, %v2965
  %2967 = vmatmul.f32.gmra.mxu0 %v1224
  %v2968 = vpop.f32.mrf.mxu0
  %v2969 = vadd.f32 %v623, %v2968
  %2970 = vmatmul.f32.gmra.mxu0 %v1227
  %v2971 = vpop.f32.mrf.mxu0
  %v2972 = vadd.f32 %v623, %v2971
  %2973 = vmatmul.f32.gmra.mxu0 %v1230
  %v2974 = vpop.f32.mrf.mxu0
  %v2975 = vadd.f32 %v623, %v2974
  %2976 = vmatmul.f32.gmra.mxu0 %v1233
  %v2977 = vpop.f32.mrf.mxu0
  %v2978 = vadd.f32 %v623, %v2977
  %2979 = vmatmul.f32.gmra.mxu0 %v1236
  %v2980 = vpop.f32.mrf.mxu0
  %v2981 = vadd.f32 %v623, %v2980
  %2982 = vmatmul.f32.gmra.mxu0 %v1239
  %v2983 = vpop.f32.mrf.mxu0
  %v2984 = vadd.f32 %v623, %v2983
  %2985 = vmatmul.f32.gmra.mxu0 %v1242
  %v2986 = vpop.f32.mrf.mxu0
  %v2987 = vadd.f32 %v623, %v2986
  %2988 = vmatmul.f32.gmra.mxu0 %v1245
  %v2989 = vpop.f32.mrf.mxu0
  %v2990 = vadd.f32 %v623, %v2989
  %2991 = vmatmul.f32.gmra.mxu0 %v1248
  %v2992 = vpop.f32.mrf.mxu0
  %v2993 = vadd.f32 %v623, %v2992
  %2994 = vmatmul.f32.gmra.mxu0 %v1251
  %v2995 = vpop.f32.mrf.mxu0
  %v2996 = vadd.f32 %v623, %v2995
  %2997 = vmatmul.f32.gmra.mxu0 %v1254
  %v2998 = vpop.f32.mrf.mxu0
  %v2999 = vadd.f32 %v623, %v2998
  %3000 = vmatmul.f32.gmra.mxu0 %v1257
  %v3001 = vpop.f32.mrf.mxu0
  %v3002 = vadd.f32 %v623, %v3001
  %3003 = vmatmul.f32.gmra.mxu0 %v1260
  %v3004 = vpop.f32.mrf.mxu0
  %v3005 = vadd.f32 %v623, %v3004
  %3006 = vmatmul.f32.gmra.mxu0 %v1263
  %v3007 = vpop.f32.mrf.mxu0
  %v3008 = vadd.f32 %v623, %v3007
  %3009 = vmatmul.f32.gmra.mxu0 %v1266
  %v3010 = vpop.f32.mrf.mxu0
  %v3011 = vadd.f32 %v623, %v3010
  %3012 = vmatmul.f32.gmra.mxu0 %v1269
  %v3013 = vpop.f32.mrf.mxu0
  %v3014 = vadd.f32 %v623, %v3013
  %3015 = vmatmul.f32.gmra.mxu0 %v1272
  %v3016 = vpop.f32.mrf.mxu0
  %v3017 = vadd.f32 %v623, %v3016
  %3018 = vmatmul.f32.gmra.mxu0 %v1275
  %v3019 = vpop.f32.mrf.mxu0
  %v3020 = vadd.f32 %v623, %v3019
  %3021 = vmatmul.f32.gmra.mxu0 %v1278
  %v3022 = vpop.f32.mrf.mxu0
  %v3023 = vadd.f32 %v623, %v3022
  %3024 = vmatmul.f32.gmra.mxu0 %v1281
  %v3025 = vpop.f32.mrf.mxu0
  %v3026 = vadd.f32 %v623, %v3025
  %3027 = vmatmul.f32.gmra.mxu0 %v1284
  %v3028 = vpop.f32.mrf.mxu0
  %v3029 = vadd.f32 %v623, %v3028
  %3030 = vmatmul.f32.gmra.mxu0 %v1287
  %v3031 = vpop.f32.mrf.mxu0
  %v3032 = vadd.f32 %v623, %v3031
  %3033 = vmatmul.f32.gmra.mxu0 %v1290
  %v3034 = vpop.f32.mrf.mxu0
  %v3035 = vadd.f32 %v623, %v3034
  %3036 = vmatmul.f32.gmra.mxu0 %v1293
  %v3037 = vpop.f32.mrf.mxu0
  %v3038 = vadd.f32 %v623, %v3037
  %3039 = vmatmul.f32.gmra.mxu0 %v1296
  %v3040 = vpop.f32.mrf.mxu0
  %v3041 = vadd.f32 %v623, %v3040
  %3042 = vmatmul.f32.gmra.mxu0 %v1299
  %v3043 = vpop.f32.mrf.mxu0
  %v3044 = vadd.f32 %v623, %v3043
  %3045 = vmatmul.f32.gmra.mxu0 %v1302
  %v3046 = vpop.f32.mrf.mxu0
  %v3047 = vadd.f32 %v623, %v3046
  %3048 = vmatmul.f32.gmra.mxu0 %v1305
  %v3049 = vpop.f32.mrf.mxu0
  %v3050 = vadd.f32 %v623, %v3049
  %3051 = vmatmul.f32.gmra.mxu0 %v1308
  %v3052 = vpop.f32.mrf.mxu0
  %v3053 = vadd.f32 %v623, %v3052
  %3054 = vmatmul.f32.gmra.mxu0 %v1311
  %v3055 = vpop.f32.mrf.mxu0
  %v3056 = vadd.f32 %v623, %v3055
  %3057 = vmatmul.f32.gmra.mxu0 %v1314
  %v3058 = vpop.f32.mrf.mxu0
  %v3059 = vadd.f32 %v623, %v3058
  %3060 = vmatmul.f32.gmra.mxu0 %v1317
  %v3061 = vpop.f32.mrf.mxu0
  %v3062 = vadd.f32 %v623, %v3061
  %3063 = vmatmul.f32.gmra.mxu0 %v1320
  %v3064 = vpop.f32.mrf.mxu0
  %v3065 = vadd.f32 %v623, %v3064
  %3066 = vmatmul.f32.gmra.mxu0 %v1323
  %v3067 = vpop.f32.mrf.mxu0
  %v3068 = vadd.f32 %v623, %v3067
  %3069 = vmatmul.f32.gmra.mxu0 %v1326
  %v3070 = vpop.f32.mrf.mxu0
  %v3071 = vadd.f32 %v623, %v3070
  %3072 = vmatmul.f32.gmra.mxu0 %v1329
  %v3073 = vpop.f32.mrf.mxu0
  %v3074 = vadd.f32 %v623, %v3073
  %3075 = vmatmul.f32.gmra.mxu0 %v1332
  %v3076 = vpop.f32.mrf.mxu0
  %v3077 = vadd.f32 %v623, %v3076
  %3078 = vmatmul.f32.gmra.mxu0 %v1335
  %v3079 = vpop.f32.mrf.mxu0
  %v3080 = vadd.f32 %v623, %v3079
  %3081 = vmatmul.f32.gmra.mxu0 %v1338
  %v3082 = vpop.f32.mrf.mxu0
  %v3083 = vadd.f32 %v623, %v3082
  %3084 = vmatmul.f32.gmra.mxu0 %v1341
  %v3085 = vpop.f32.mrf.mxu0
  %v3086 = vadd.f32 %v623, %v3085
  %3087 = vmatmul.f32.gmra.mxu0 %v1344
  %v3088 = vpop.f32.mrf.mxu0
  %v3089 = vadd.f32 %v623, %v3088
  %3090 = vmatmul.f32.gmra.mxu0 %v1347
  %v3091 = vpop.f32.mrf.mxu0
  %v3092 = vadd.f32 %v623, %v3091
  %3093 = vmatmul.f32.gmra.mxu0 %v1350
  %v3094 = vpop.f32.mrf.mxu0
  %v3095 = vadd.f32 %v623, %v3094
  %3096 = vmatmul.f32.gmra.mxu0 %v1353
  %v3097 = vpop.f32.mrf.mxu0
  %v3098 = vadd.f32 %v623, %v3097
  %3099 = vmatmul.f32.gmra.mxu0 %v1356
  %v3100 = vpop.f32.mrf.mxu0
  %v3101 = vadd.f32 %v623, %v3100
  %3102 = vmatmul.f32.gmra.mxu0 %v1359
  %v3103 = vpop.f32.mrf.mxu0
  %v3104 = vadd.f32 %v623, %v3103
  %3105 = vmatmul.f32.gmra.mxu0 %v1362
  %v3106 = vpop.f32.mrf.mxu0
  %v3107 = vadd.f32 %v623, %v3106
  %3108 = vmatmul.f32.gmra.mxu0 %v1365
  %v3109 = vpop.f32.mrf.mxu0
  %v3110 = vadd.f32 %v623, %v3109
  %3111 = vmatmul.f32.gmra.mxu0 %v1368
  %v3112 = vpop.f32.mrf.mxu0
  %v3113 = vadd.f32 %v623, %v3112
  %3114 = vmatmul.f32.gmra.mxu0 %v1371
  %v3115 = vpop.f32.mrf.mxu0
  %v3116 = vadd.f32 %v623, %v3115
  %3117 = vmatmul.f32.gmra.mxu0 %v1374
  %v3118 = vpop.f32.mrf.mxu0
  %v3119 = vadd.f32 %v623, %v3118
  %3120 = vmatmul.f32.gmra.mxu0 %v1377
  %v3121 = vpop.f32.mrf.mxu0
  %v3122 = vadd.f32 %v623, %v3121
  %3123 = vmatmul.f32.gmra.mxu0 %v1380
  %v3124 = vpop.f32.mrf.mxu0
  %v3125 = vadd.f32 %v623, %v3124
  %3126 = vmatmul.f32.gmra.mxu0 %v1383
  %v3127 = vpop.f32.mrf.mxu0
  %v3128 = vadd.f32 %v623, %v3127
  %3129 = vmatmul.f32.gmra.mxu0 %v1386
  %v3130 = vpop.f32.mrf.mxu0
  %v3131 = vadd.f32 %v623, %v3130
  %3132 = vmatmul.f32.gmra.mxu0 %v1389
  %v3133 = vpop.f32.mrf.mxu0
  %v3134 = vadd.f32 %v623, %v3133
  %3135 = vmatmul.f32.gmra.mxu0 %v1392
  %v3136 = vpop.f32.mrf.mxu0
  %v3137 = vadd.f32 %v623, %v3136
  %3138 = vmatmul.f32.gmra.mxu0 %v1395
  %v3139 = vpop.f32.mrf.mxu0
  %v3140 = vadd.f32 %v623, %v3139
  %3141 = vmatmul.f32.gmra.mxu0 %v1398
  %v3142 = vpop.f32.mrf.mxu0
  %v3143 = vadd.f32 %v623, %v3142
  %3144 = vmatmul.f32.gmra.mxu0 %v1401
  %v3145 = vpop.f32.mrf.mxu0
  %v3146 = vadd.f32 %v623, %v3145
  %3147 = vmatmul.f32.gmra.mxu0 %v1404
  %v3148 = vpop.f32.mrf.mxu0
  %v3149 = vadd.f32 %v623, %v3148
  %3150 = vmatmul.f32.gmra.mxu0 %v1407
  %v3151 = vpop.f32.mrf.mxu0
  %v3152 = vadd.f32 %v623, %v3151
  %3153 = vmatmul.f32.gmra.mxu0 %v1410
  %v3154 = vpop.f32.mrf.mxu0
  %v3155 = vadd.f32 %v623, %v3154
  %3156 = vmatmul.f32.gmra.mxu0 %v1413
  %v3157 = vpop.f32.mrf.mxu0
  %v3158 = vadd.f32 %v623, %v3157
  %3159 = vmatmul.f32.gmra.mxu0 %v1416
  %v3160 = vpop.f32.mrf.mxu0
  %v3161 = vadd.f32 %v623, %v3160
  %3162 = vmatmul.f32.gmra.mxu0 %v1419
  %v3163 = vpop.f32.mrf.mxu0
  %v3164 = vadd.f32 %v623, %v3163
  %3165 = vmatmul.f32.gmra.mxu0 %v1422
  %v3166 = vpop.f32.mrf.mxu0
  %v3167 = vadd.f32 %v623, %v3166
  %3168 = vmatmul.f32.gmra.mxu0 %v1425
  %v3169 = vpop.f32.mrf.mxu0
  %v3170 = vadd.f32 %v623, %v3169
  %3171 = vmatmul.f32.gmra.mxu0 %v1428
  %v3172 = vpop.f32.mrf.mxu0
  %v3173 = vadd.f32 %v623, %v3172
  %3174 = vmatmul.f32.gmra.mxu0 %v1431
  %v3175 = vpop.f32.mrf.mxu0
  %v3176 = vadd.f32 %v623, %v3175
  %3177 = vmatmul.f32.gmra.mxu0 %v1434
  %v3178 = vpop.f32.mrf.mxu0
  %v3179 = vadd.f32 %v623, %v3178
  %3180 = vmatmul.f32.gmra.mxu0 %v1437
  %v3181 = vpop.f32.mrf.mxu0
  %v3182 = vadd.f32 %v623, %v3181
  %3183 = vmatmul.f32.gmra.mxu0 %v1440
  %v3184 = vpop.f32.mrf.mxu0
  %v3185 = vadd.f32 %v623, %v3184
  %3186 = vmatmul.f32.gmra.mxu0 %v1443
  %v3187 = vpop.f32.mrf.mxu0
  %v3188 = vadd.f32 %v623, %v3187
  %3189 = vmatmul.f32.gmra.mxu0 %v1446
  %v3190 = vpop.f32.mrf.mxu0
  %v3191 = vadd.f32 %v623, %v3190
  %3192 = vmatmul.f32.gmra.mxu0 %v1449
  %v3193 = vpop.f32.mrf.mxu0
  %v3194 = vadd.f32 %v623, %v3193
  %3195 = vmatmul.f32.gmra.mxu0 %v1452
  %v3196 = vpop.f32.mrf.mxu0
  %v3197 = vadd.f32 %v623, %v3196
  %3198 = vmatmul.f32.gmra.mxu0 %v1455
  %v3199 = vpop.f32.mrf.mxu0
  %v3200 = vadd.f32 %v623, %v3199
  %3201 = vmatmul.f32.gmra.mxu0 %v1458
  %v3202 = vpop.f32.mrf.mxu0
  %v3203 = vadd.f32 %v623, %v3202
  %3204 = vmatmul.f32.gmra.mxu0 %v1461
  %v3205 = vpop.f32.mrf.mxu0
  %v3206 = vadd.f32 %v623, %v3205
  %3207 = vmatmul.f32.gmra.mxu0 %v1464
  %v3208 = vpop.f32.mrf.mxu0
  %v3209 = vadd.f32 %v623, %v3208
  %3210 = vmatmul.f32.gmra.mxu0 %v1467
  %v3211 = vpop.f32.mrf.mxu0
  %v3212 = vadd.f32 %v623, %v3211
  %3213 = vmatmul.f32.gmra.mxu0 %v1470
  %v3214 = vpop.f32.mrf.mxu0
  %v3215 = vadd.f32 %v623, %v3214
  %3216 = vmatmul.f32.gmra.mxu0 %v1473
  %v3217 = vpop.f32.mrf.mxu0
  %v3218 = vadd.f32 %v623, %v3217
  %3219 = vmatmul.f32.gmra.mxu0 %v1476
  %v3220 = vpop.f32.mrf.mxu0
  %v3221 = vadd.f32 %v623, %v3220
  %3222 = vmatmul.f32.gmra.mxu0 %v1479
  %v3223 = vpop.f32.mrf.mxu0
  %v3224 = vadd.f32 %v623, %v3223
  %3225 = vmatmul.f32.gmra.mxu0 %v1482
  %v3226 = vpop.f32.mrf.mxu0
  %v3227 = vadd.f32 %v623, %v3226
  %3228 = vmatmul.f32.gmra.mxu0 %v1485
  %v3229 = vpop.f32.mrf.mxu0
  %v3230 = vadd.f32 %v623, %v3229
  %3231 = vmatmul.f32.gmra.mxu0 %v1488
  %v3232 = vpop.f32.mrf.mxu0
  %v3233 = vadd.f32 %v623, %v3232
  %3234 = vmatmul.f32.gmra.mxu0 %v1491
  %v3235 = vpop.f32.mrf.mxu0
  %v3236 = vadd.f32 %v623, %v3235
  %3237 = vmatmul.f32.gmra.mxu0 %v1494
  %v3238 = vpop.f32.mrf.mxu0
  %v3239 = vadd.f32 %v623, %v3238
  %3240 = vmatmul.f32.gmra.mxu0 %v1497
  %v3241 = vpop.f32.mrf.mxu0
  %v3242 = vadd.f32 %v623, %v3241
  %3243 = vmatmul.f32.gmra.mxu0 %v1500
  %v3244 = vpop.f32.mrf.mxu0
  %v3245 = vadd.f32 %v623, %v3244
  %3246 = vmatmul.f32.gmra.mxu0 %v1503
  %v3247 = vpop.f32.mrf.mxu0
  %v3248 = vadd.f32 %v623, %v3247
  %3249 = vmatmul.f32.gmra.mxu0 %v1506
  %v3250 = vpop.f32.mrf.mxu0
  %v3251 = vadd.f32 %v623, %v3250
  %3252 = vmatmul.f32.gmra.mxu0 %v1509
  %v3253 = vpop.f32.mrf.mxu0
  %v3254 = vadd.f32 %v623, %v3253
  %3255 = vmatmul.f32.gmra.mxu0 %v1512
  %v3256 = vpop.f32.mrf.mxu0
  %v3257 = vadd.f32 %v623, %v3256
  %3258 = vmatmul.f32.gmra.mxu0 %v1515
  %v3259 = vpop.f32.mrf.mxu0
  %v3260 = vadd.f32 %v623, %v3259
  %3261 = vmatmul.f32.gmra.mxu0 %v1518
  %v3262 = vpop.f32.mrf.mxu0
  %v3263 = vadd.f32 %v623, %v3262
  %3264 = vmatmul.f32.gmra.mxu0 %v1521
  %v3265 = vpop.f32.mrf.mxu0
  %v3266 = vadd.f32 %v623, %v3265
  %3267 = vmatmul.f32.gmra.mxu0 %v1524
  %v3268 = vpop.f32.mrf.mxu0
  %v3269 = vadd.f32 %v623, %v3268
  %3270 = vmatmul.f32.gmra.mxu0 %v1527
  %v3271 = vpop.f32.mrf.mxu0
  %v3272 = vadd.f32 %v623, %v3271
  %3273 = vmatmul.f32.gmra.mxu0 %v1530
  %v3274 = vpop.f32.mrf.mxu0
  %v3275 = vadd.f32 %v623, %v3274
  %3276 = vmatmul.f32.gmra.mxu0 %v1533
  %v3277 = vpop.f32.mrf.mxu0
  %v3278 = vadd.f32 %v623, %v3277
  %3279 = vmatmul.f32.gmra.mxu0 %v1536
  %v3280 = vpop.f32.mrf.mxu0
  %v3281 = vadd.f32 %v623, %v3280
  %3282 = vmatmul.f32.gmra.mxu0 %v1539
  %v3283 = vpop.f32.mrf.mxu0
  %v3284 = vadd.f32 %v623, %v3283
  %3285 = vmatmul.f32.gmra.mxu0 %v1542
  %v3286 = vpop.f32.mrf.mxu0
  %v3287 = vadd.f32 %v623, %v3286
  %3288 = vmatmul.f32.gmra.mxu0 %v1545
  %v3289 = vpop.f32.mrf.mxu0
  %v3290 = vadd.f32 %v623, %v3289
  %3291 = vmatmul.f32.gmra.mxu0 %v1548
  %v3292 = vpop.f32.mrf.mxu0
  %v3293 = vadd.f32 %v623, %v3292
  %3294 = vmatmul.f32.gmra.mxu0 %v1551
  %v3295 = vpop.f32.mrf.mxu0
  %v3296 = vadd.f32 %v623, %v3295
  %3297 = vmatmul.f32.gmra.mxu0 %v1554
  %v3298 = vpop.f32.mrf.mxu0
  %v3299 = vadd.f32 %v623, %v3298
  %3300 = vmatmul.f32.gmra.mxu0 %v1557
  %v3301 = vpop.f32.mrf.mxu0
  %v3302 = vadd.f32 %v623, %v3301
  %3303 = vmatmul.f32.gmra.mxu0 %v1560
  %v3304 = vpop.f32.mrf.mxu0
  %v3305 = vadd.f32 %v623, %v3304
  %3306 = vmatmul.f32.gmra.mxu0 %v1563
  %v3307 = vpop.f32.mrf.mxu0
  %v3308 = vadd.f32 %v623, %v3307
  %3309 = vmatmul.f32.gmra.mxu0 %v1566
  %v3310 = vpop.f32.mrf.mxu0
  %v3311 = vadd.f32 %v623, %v3310
  %3312 = vmatmul.f32.gmra.mxu0 %v1569
  %v3313 = vpop.f32.mrf.mxu0
  %v3314 = vadd.f32 %v623, %v3313
  %3315 = vmatmul.f32.gmra.mxu0 %v1572
  %v3316 = vpop.f32.mrf.mxu0
  %v3317 = vadd.f32 %v623, %v3316
  %3318 = vmatmul.f32.gmra.mxu0 %v1575
  %v3319 = vpop.f32.mrf.mxu0
  %v3320 = vadd.f32 %v623, %v3319
  %3321 = vmatmul.f32.gmra.mxu0 %v1578
  %v3322 = vpop.f32.mrf.mxu0
  %v3323 = vadd.f32 %v623, %v3322
  %3324 = vmatmul.f32.gmra.mxu0 %v1581
  %v3325 = vpop.f32.mrf.mxu0
  %v3326 = vadd.f32 %v623, %v3325
  %3327 = vmatmul.f32.gmra.mxu0 %v1584
  %v3328 = vpop.f32.mrf.mxu0
  %v3329 = vadd.f32 %v623, %v3328
  %3330 = vmatmul.f32.gmra.mxu0 %v1587
  %v3331 = vpop.f32.mrf.mxu0
  %v3332 = vadd.f32 %v623, %v3331
  %3333 = vmatmul.f32.gmra.mxu0 %v1590
  %v3334 = vpop.f32.mrf.mxu0
  %v3335 = vadd.f32 %v623, %v3334
  %3336 = vmatmul.f32.gmra.mxu0 %v1593
  %v3337 = vpop.f32.mrf.mxu0
  %v3338 = vadd.f32 %v623, %v3337
  %3339 = vmatmul.f32.gmra.mxu0 %v1596
  %v3340 = vpop.f32.mrf.mxu0
  %v3341 = vadd.f32 %v623, %v3340
  %3342 = vmatmul.f32.gmra.mxu0 %v1599
  %v3343 = vpop.f32.mrf.mxu0
  %v3344 = vadd.f32 %v623, %v3343
  %3345 = vmatmul.f32.gmra.mxu0 %v1602
  %v3346 = vpop.f32.mrf.mxu0
  %v3347 = vadd.f32 %v623, %v3346
  %3348 = vmatmul.f32.gmra.mxu0 %v1605
  %v3349 = vpop.f32.mrf.mxu0
  %v3350 = vadd.f32 %v623, %v3349
  %3351 = vmatmul.f32.gmra.mxu0 %v1608
  %v3352 = vpop.f32.mrf.mxu0
  %v3353 = vadd.f32 %v623, %v3352
  %3354 = vmatmul.f32.gmra.mxu0 %v1611
  %v3355 = vpop.f32.mrf.mxu0
  %v3356 = vadd.f32 %v623, %v3355
  %3357 = vmatmul.f32.gmra.mxu0 %v1614
  %v3358 = vpop.f32.mrf.mxu0
  %v3359 = vadd.f32 %v623, %v3358
  %3360 = vmatmul.f32.gmra.mxu0 %v1617
  %v3361 = vpop.f32.mrf.mxu0
  %v3362 = vadd.f32 %v623, %v3361
  %3363 = vmatmul.f32.gmra.mxu0 %v1620
  %v3364 = vpop.f32.mrf.mxu0
  %v3365 = vadd.f32 %v623, %v3364
  %3366 = vmatmul.f32.gmra.mxu0 %v1623
  %v3367 = vpop.f32.mrf.mxu0
  %v3368 = vadd.f32 %v623, %v3367
  %3369 = vmatmul.f32.gmra.mxu0 %v1626
  %v3370 = vpop.f32.mrf.mxu0
  %v3371 = vadd.f32 %v623, %v3370
  %3372 = vmatmul.f32.gmra.mxu0 %v1629
  %v3373 = vpop.f32.mrf.mxu0
  %v3374 = vadd.f32 %v623, %v3373
  %3375 = vmatmul.f32.gmra.mxu0 %v1632
  %v3376 = vpop.f32.mrf.mxu0
  %v3377 = vadd.f32 %v623, %v3376
  %3378 = vmatmul.f32.gmra.mxu0 %v1635
  %v3379 = vpop.f32.mrf.mxu0
  %v3380 = vadd.f32 %v623, %v3379
  %3381 = vmatmul.f32.gmra.mxu0 %v1638
  %v3382 = vpop.f32.mrf.mxu0
  %v3383 = vadd.f32 %v623, %v3382
  %3384 = vmatmul.f32.gmra.mxu0 %v1641
  %v3385 = vpop.f32.mrf.mxu0
  %v3386 = vadd.f32 %v623, %v3385
  %3387 = vmatmul.f32.gmra.mxu0 %v1644
  %v3388 = vpop.f32.mrf.mxu0
  %v3389 = vadd.f32 %v623, %v3388
  %3390 = vmatmul.f32.gmra.mxu0 %v1647
  %v3391 = vpop.f32.mrf.mxu0
  %v3392 = vadd.f32 %v623, %v3391
  %3393 = vmatmul.f32.gmra.mxu0 %v1650
  %v3394 = vpop.f32.mrf.mxu0
  %v3395 = vadd.f32 %v623, %v3394
  %3396 = vmatmul.f32.gmra.mxu0 %v1653
  %v3397 = vpop.f32.mrf.mxu0
  %v3398 = vadd.f32 %v623, %v3397
  %3399 = vmatmul.f32.gmra.mxu0 %v1656
  %v3400 = vpop.f32.mrf.mxu0
  %v3401 = vadd.f32 %v623, %v3400
  %3402 = vmatmul.f32.gmra.mxu0 %v1659
  %v3403 = vpop.f32.mrf.mxu0
  %v3404 = vadd.f32 %v623, %v3403
  %3405 = vmatmul.f32.gmra.mxu0 %v1662
  %v3406 = vpop.f32.mrf.mxu0
  %v3407 = vadd.f32 %v623, %v3406
  %3408 = vmatmul.f32.gmra.mxu0 %v1665
  %v3409 = vpop.f32.mrf.mxu0
  %v3410 = vadd.f32 %v623, %v3409
  %3411 = vmatmul.f32.gmra.mxu0 %v1668
  %v3412 = vpop.f32.mrf.mxu0
  %v3413 = vadd.f32 %v623, %v3412
  %3414 = vmatmul.f32.gmra.mxu0 %v1671
  %v3415 = vpop.f32.mrf.mxu0
  %v3416 = vadd.f32 %v623, %v3415
  %3417 = vmatmul.f32.gmra.mxu0 %v1674
  %v3418 = vpop.f32.mrf.mxu0
  %v3419 = vadd.f32 %v623, %v3418
  %3420 = vmatmul.f32.gmra.mxu0 %v1677
  %v3421 = vpop.f32.mrf.mxu0
  %v3422 = vadd.f32 %v623, %v3421
  %3423 = vmatmul.f32.gmra.mxu0 %v1680
  %v3424 = vpop.f32.mrf.mxu0
  %v3425 = vadd.f32 %v623, %v3424
  %3426 = vmatmul.f32.gmra.mxu0 %v1683
  %v3427 = vpop.f32.mrf.mxu0
  %v3428 = vadd.f32 %v623, %v3427
  %3429 = vmatmul.f32.gmra.mxu0 %v1686
  %v3430 = vpop.f32.mrf.mxu0
  %v3431 = vadd.f32 %v623, %v3430
  %3432 = vmatmul.f32.gmra.mxu0 %v1689
  %v3433 = vpop.f32.mrf.mxu0
  %v3434 = vadd.f32 %v623, %v3433
  %3435 = vmatmul.f32.gmra.mxu0 %v1692
  %v3436 = vpop.f32.mrf.mxu0
  %v3437 = vadd.f32 %v623, %v3436
  %3438 = vmatmul.f32.gmra.mxu0 %v1695
  %v3439 = vpop.f32.mrf.mxu0
  %v3440 = vadd.f32 %v623, %v3439
  %3441 = vmatmul.f32.gmra.mxu0 %v1698
  %v3442 = vpop.f32.mrf.mxu0
  %v3443 = vadd.f32 %v623, %v3442
  %3444 = vmatmul.f32.gmra.mxu0 %v1701
  %v3445 = vpop.f32.mrf.mxu0
  %v3446 = vadd.f32 %v623, %v3445
  %3447 = vmatmul.f32.gmra.mxu0 %v1704
  %v3448 = vpop.f32.mrf.mxu0
  %v3449 = vadd.f32 %v623, %v3448
  %3450 = vmatmul.f32.gmra.mxu0 %v1707
  %v3451 = vpop.f32.mrf.mxu0
  %v3452 = vadd.f32 %v623, %v3451
  %3453 = vmatmul.f32.gmra.mxu0 %v1710
  %v3454 = vpop.f32.mrf.mxu0
  %v3455 = vadd.f32 %v623, %v3454
  %3456 = vmatmul.f32.gmra.mxu0 %v1713
  %v3457 = vpop.f32.mrf.mxu0
  %v3458 = vadd.f32 %v623, %v3457
  %3459 = vmatmul.f32.gmra.mxu0 %v1716
  %v3460 = vpop.f32.mrf.mxu0
  %v3461 = vadd.f32 %v623, %v3460
  %3462 = vmatmul.f32.gmra.mxu0 %v1719
  %v3463 = vpop.f32.mrf.mxu0
  %v3464 = vadd.f32 %v623, %v3463
  %3465 = vmatmul.f32.gmra.mxu0 %v1722
  %v3466 = vpop.f32.mrf.mxu0
  %v3467 = vadd.f32 %v623, %v3466
  %3468 = vmatmul.f32.gmra.mxu0 %v1725
  %v3469 = vpop.f32.mrf.mxu0
  %v3470 = vadd.f32 %v623, %v3469
  %3471 = vmatmul.f32.gmra.mxu0 %v1728
  %v3472 = vpop.f32.mrf.mxu0
  %v3473 = vadd.f32 %v623, %v3472
  %3474 = vmatmul.f32.gmra.mxu0 %v1731
  %v3475 = vpop.f32.mrf.mxu0
  %v3476 = vadd.f32 %v623, %v3475
  %3477 = vmatmul.f32.gmra.mxu0 %v1734
  %v3478 = vpop.f32.mrf.mxu0
  %v3479 = vadd.f32 %v623, %v3478
  %3480 = vmatmul.f32.gmra.mxu0 %v1737
  %v3481 = vpop.f32.mrf.mxu0
  %v3482 = vadd.f32 %v623, %v3481
  %3483 = vmatmul.f32.gmra.mxu0 %v1740
  %v3484 = vpop.f32.mrf.mxu0
  %v3485 = vadd.f32 %v623, %v3484
  %3486 = vmatmul.f32.gmra.mxu0 %v1743
  %v3487 = vpop.f32.mrf.mxu0
  %v3488 = vadd.f32 %v623, %v3487
  %3489 = vmatmul.f32.gmra.mxu0 %v1746
  %v3490 = vpop.f32.mrf.mxu0
  %v3491 = vadd.f32 %v623, %v3490
  %3492 = vmatmul.f32.gmra.mxu0 %v1749
  %v3493 = vpop.f32.mrf.mxu0
  %v3494 = vadd.f32 %v623, %v3493
  %3495 = vmatmul.f32.gmra.mxu0 %v1752
  %v3496 = vpop.f32.mrf.mxu0
  %v3497 = vadd.f32 %v623, %v3496
  %3498 = vmatmul.f32.gmra.mxu0 %v1755
  %v3499 = vpop.f32.mrf.mxu0
  %v3500 = vadd.f32 %v623, %v3499
  %3501 = vmatmul.f32.gmra.mxu0 %v1758
  %v3502 = vpop.f32.mrf.mxu0
  %v3503 = vadd.f32 %v623, %v3502
  %3504 = vmatmul.f32.gmra.mxu0 %v1761
  %v3505 = vpop.f32.mrf.mxu0
  %v3506 = vadd.f32 %v623, %v3505
  %3507 = vmatmul.f32.gmra.mxu0 %v1764
  %v3508 = vpop.f32.mrf.mxu0
  %v3509 = vadd.f32 %v623, %v3508
  %3510 = vmatmul.f32.gmra.mxu0 %v1767
  %v3511 = vpop.f32.mrf.mxu0
  %v3512 = vadd.f32 %v623, %v3511
  %3513 = vmatmul.f32.gmra.mxu0 %v1770
  %v3514 = vpop.f32.mrf.mxu0
  %v3515 = vadd.f32 %v623, %v3514
  %3516 = vmatmul.f32.gmra.mxu0 %v1773
  %v3517 = vpop.f32.mrf.mxu0
  %v3518 = vadd.f32 %v623, %v3517
  %3519 = vmatmul.f32.gmra.mxu0 %v1776
  %v3520 = vpop.f32.mrf.mxu0
  %v3521 = vadd.f32 %v623, %v3520
  %3522 = vmatmul.f32.gmra.mxu0 %v1779
  %v3523 = vpop.f32.mrf.mxu0
  %v3524 = vadd.f32 %v623, %v3523
  %3525 = vmatmul.f32.gmra.mxu0 %v1782
  %v3526 = vpop.f32.mrf.mxu0
  %v3527 = vadd.f32 %v623, %v3526
  %3528 = vmatmul.f32.gmra.mxu0 %v1785
  %v3529 = vpop.f32.mrf.mxu0
  %v3530 = vadd.f32 %v623, %v3529
  %3531 = vmatmul.f32.gmra.mxu0 %v1788
  %v3532 = vpop.f32.mrf.mxu0
  %v3533 = vadd.f32 %v623, %v3532
  %3534 = vmatmul.f32.gmra.mxu0 %v1791
  %v3535 = vpop.f32.mrf.mxu0
  %v3536 = vadd.f32 %v623, %v3535
  %3537 = vmatmul.f32.gmra.mxu0 %v1794
  %v3538 = vpop.f32.mrf.mxu0
  %v3539 = vadd.f32 %v623, %v3538
  %3540 = vmatmul.f32.gmra.mxu0 %v1797
  %v3541 = vpop.f32.mrf.mxu0
  %v3542 = vadd.f32 %v623, %v3541
  %3543 = vmatmul.f32.gmra.mxu0 %v1800
  %v3544 = vpop.f32.mrf.mxu0
  %v3545 = vadd.f32 %v623, %v3544
  %3546 = vmatmul.f32.gmra.mxu0 %v1803
  %v3547 = vpop.f32.mrf.mxu0
  %v3548 = vadd.f32 %v623, %v3547
  %3549 = vmatmul.f32.gmra.mxu0 %v1806
  %v3550 = vpop.f32.mrf.mxu0
  %v3551 = vadd.f32 %v623, %v3550
  %3552 = vmatmul.f32.gmra.mxu0 %v1809
  %v3553 = vpop.f32.mrf.mxu0
  %v3554 = vadd.f32 %v623, %v3553
  %3555 = vmatmul.f32.gmra.mxu0 %v1812
  %v3556 = vpop.f32.mrf.mxu0
  %v3557 = vadd.f32 %v623, %v3556
  %3558 = vmatmul.f32.gmra.mxu0 %v1815
  %v3559 = vpop.f32.mrf.mxu0
  %v3560 = vadd.f32 %v623, %v3559
  %3561 = vmatmul.f32.gmra.mxu0 %v1818
  %v3562 = vpop.f32.mrf.mxu0
  %v3563 = vadd.f32 %v623, %v3562
  %3564 = vmatmul.f32.gmra.mxu0 %v1821
  %v3565 = vpop.f32.mrf.mxu0
  %v3566 = vadd.f32 %v623, %v3565
  %3567 = vmatmul.f32.gmra.mxu0 %v1824
  %v3568 = vpop.f32.mrf.mxu0
  %v3569 = vadd.f32 %v623, %v3568
  %3570 = vmatmul.f32.gmra.mxu0 %v1827
  %v3571 = vpop.f32.mrf.mxu0
  %v3572 = vadd.f32 %v623, %v3571
  %3573 = vmatmul.f32.gmra.mxu0 %v1830
  %v3574 = vpop.f32.mrf.mxu0
  %v3575 = vadd.f32 %v623, %v3574
  %3576 = vmatmul.f32.gmra.mxu0 %v1833
  %v3577 = vpop.f32.mrf.mxu0
  %v3578 = vadd.f32 %v623, %v3577
  %3579 = vmatmul.f32.gmra.mxu0 %v1836
  %v3580 = vpop.f32.mrf.mxu0
  %v3581 = vadd.f32 %v623, %v3580
  %3582 = vmatmul.f32.gmra.mxu0 %v1839
  %v3583 = vpop.f32.mrf.mxu0
  %v3584 = vadd.f32 %v623, %v3583
  %3585 = vmatmul.f32.gmra.mxu0 %v1842
  %v3586 = vpop.f32.mrf.mxu0
  %v3587 = vadd.f32 %v623, %v3586
  %3588 = vmatmul.f32.gmra.mxu0 %v1845
  %v3589 = vpop.f32.mrf.mxu0
  %v3590 = vadd.f32 %v623, %v3589
  %3591 = vmatmul.f32.gmra.mxu0 %v1848
  %v3592 = vpop.f32.mrf.mxu0
  %v3593 = vadd.f32 %v623, %v3592
  %3594 = vmatmul.f32.gmra.mxu0 %v1851
  %v3595 = vpop.f32.mrf.mxu0
  %v3596 = vadd.f32 %v623, %v3595
  %3597 = vmatmul.f32.gmra.mxu0 %v1854
  %v3598 = vpop.f32.mrf.mxu0
  %v3599 = vadd.f32 %v623, %v3598
  %3600 = vmatmul.f32.gmra.mxu0 %v1857
  %v3601 = vpop.f32.mrf.mxu0
  %v3602 = vadd.f32 %v623, %v3601
  %3603 = vmatmul.f32.gmra.mxu0 %v1860
  %v3604 = vpop.f32.mrf.mxu0
  %v3605 = vadd.f32 %v623, %v3604
  %3606 = vmatmul.f32.gmra.mxu0 %v1863
  %v3607 = vpop.f32.mrf.mxu0
  %v3608 = vadd.f32 %v623, %v3607
  %3609 = vmatmul.f32.gmra.mxu0 %v1866
  %v3610 = vpop.f32.mrf.mxu0
  %v3611 = vadd.f32 %v623, %v3610
  %3612 = vmatmul.f32.gmra.mxu0 %v1869
  %v3613 = vpop.f32.mrf.mxu0
  %v3614 = vadd.f32 %v623, %v3613
  %3615 = vmatmul.f32.gmra.mxu0 %v1872
  %v3616 = vpop.f32.mrf.mxu0
  %v3617 = vadd.f32 %v623, %v3616
  %3618 = vmatmul.f32.gmra.mxu0 %v1875
  %v3619 = vpop.f32.mrf.mxu0
  %v3620 = vadd.f32 %v623, %v3619
  %3621 = vmatmul.f32.gmra.mxu0 %v1878
  %v3622 = vpop.f32.mrf.mxu0
  %v3623 = vadd.f32 %v623, %v3622
  %3624 = vmatmul.f32.gmra.mxu0 %v1881
  %v3625 = vpop.f32.mrf.mxu0
  %v3626 = vadd.f32 %v623, %v3625
  %3627 = vmatmul.f32.gmra.mxu0 %v1884
  %v3628 = vpop.f32.mrf.mxu0
  %v3629 = vadd.f32 %v623, %v3628
  %3630 = vmatmul.f32.gmra.mxu0 %v1887
  %v3631 = vpop.f32.mrf.mxu0
  %v3632 = vadd.f32 %v623, %v3631
  %3633 = vmatmul.f32.gmra.mxu0 %v1890
  %v3634 = vpop.f32.mrf.mxu0
  %v3635 = vadd.f32 %v623, %v3634
  %3636 = vmatmul.f32.gmra.mxu0 %v1893
  %v3637 = vpop.f32.mrf.mxu0
  %v3638 = vadd.f32 %v623, %v3637
  %3639 = vmatmul.f32.gmra.mxu0 %v1896
  %v3640 = vpop.f32.mrf.mxu0
  %v3641 = vadd.f32 %v623, %v3640
  %3642 = vmatmul.f32.gmra.mxu0 %v1899
  %v3643 = vpop.f32.mrf.mxu0
  %v3644 = vadd.f32 %v623, %v3643
  %3645 = vmatmul.f32.gmra.mxu0 %v1902
  %v3646 = vpop.f32.mrf.mxu0
  %v3647 = vadd.f32 %v623, %v3646
  %3648 = vmatmul.f32.gmra.mxu0 %v1905
  %v3649 = vpop.f32.mrf.mxu0
  %v3650 = vadd.f32 %v623, %v3649
  %3651 = vmatmul.f32.gmra.mxu0 %v1908
  %v3652 = vpop.f32.mrf.mxu0
  %v3653 = vadd.f32 %v623, %v3652
  %3654 = vmatmul.f32.gmra.mxu0 %v1911
  %v3655 = vpop.f32.mrf.mxu0
  %v3656 = vadd.f32 %v623, %v3655
  %3657 = vmatmul.f32.gmra.mxu0 %v1914
  %v3658 = vpop.f32.mrf.mxu0
  %v3659 = vadd.f32 %v623, %v3658
  %3660 = vmatmul.f32.gmra.mxu0 %v1917
  %v3661 = vpop.f32.mrf.mxu0
  %v3662 = vadd.f32 %v623, %v3661
  %3663 = vmatmul.f32.gmra.mxu0 %v1920
  %v3664 = vpop.f32.mrf.mxu0
  %v3665 = vadd.f32 %v623, %v3664
  %3666 = vmatmul.f32.gmra.mxu0 %v1923
  %v3667 = vpop.f32.mrf.mxu0
  %v3668 = vadd.f32 %v623, %v3667
  %3669 = vmatmul.f32.gmra.mxu0 %v1926
  %v3670 = vpop.f32.mrf.mxu0
  %v3671 = vadd.f32 %v623, %v3670
  %3672 = vmatmul.f32.gmra.mxu0 %v1929
  %v3673 = vpop.f32.mrf.mxu0
  %v3674 = vadd.f32 %v623, %v3673
  %3675 = vmatmul.f32.gmra.mxu0 %v1932
  %v3676 = vpop.f32.mrf.mxu0
  %v3677 = vadd.f32 %v623, %v3676
  %3678 = vmatmul.f32.gmra.mxu0 %v1935
  %v3679 = vpop.f32.mrf.mxu0
  %v3680 = vadd.f32 %v623, %v3679
  %3681 = vmatmul.f32.gmra.mxu0 %v1938
  %v3682 = vpop.f32.mrf.mxu0
  %v3683 = vadd.f32 %v623, %v3682
  %3684 = vmatmul.f32.gmra.mxu0 %v1941
  %v3685 = vpop.f32.mrf.mxu0
  %v3686 = vadd.f32 %v623, %v3685
  %3687 = vmatmul.f32.gmra.mxu0 %v1944
  %v3688 = vpop.f32.mrf.mxu0
  %v3689 = vadd.f32 %v623, %v3688
  %3690 = vmatmul.f32.gmra.mxu0 %v1947
  %v3691 = vpop.f32.mrf.mxu0
  %v3692 = vadd.f32 %v623, %v3691
  %3693 = vmatmul.f32.gmra.mxu0 %v1950
  %v3694 = vpop.f32.mrf.mxu0
  %v3695 = vadd.f32 %v623, %v3694
  %3696 = vmatmul.f32.gmra.mxu0 %v1953
  %v3697 = vpop.f32.mrf.mxu0
  %v3698 = vadd.f32 %v623, %v3697
  %3699 = vmatmul.f32.gmra.mxu0 %v1956
  %v3700 = vpop.f32.mrf.mxu0
  %v3701 = vadd.f32 %v623, %v3700
  %3702 = vmatmul.f32.gmra.mxu0 %v1959
  %v3703 = vpop.f32.mrf.mxu0
  %v3704 = vadd.f32 %v623, %v3703
  %3705 = vmatmul.f32.gmra.mxu0 %v1962
  %v3706 = vpop.f32.mrf.mxu0
  %v3707 = vadd.f32 %v623, %v3706
  %3708 = vmatmul.f32.gmra.mxu0 %v1965
  %v3709 = vpop.f32.mrf.mxu0
  %v3710 = vadd.f32 %v623, %v3709
  %3711 = vmatmul.f32.gmra.mxu0 %v1968
  %v3712 = vpop.f32.mrf.mxu0
  %v3713 = vadd.f32 %v623, %v3712
  %3714 = vmatmul.f32.gmra.mxu0 %v1971
  %v3715 = vpop.f32.mrf.mxu0
  %v3716 = vadd.f32 %v623, %v3715
  %3717 = vmatmul.f32.gmra.mxu0 %v1974
  %v3718 = vpop.f32.mrf.mxu0
  %v3719 = vadd.f32 %v623, %v3718
  %3720 = vmatmul.f32.gmra.mxu0 %v1977
  %v3721 = vpop.f32.mrf.mxu0
  %v3722 = vadd.f32 %v623, %v3721
  %3723 = vmatmul.f32.gmra.mxu0 %v1980
  %v3724 = vpop.f32.mrf.mxu0
  %v3725 = vadd.f32 %v623, %v3724
  %3726 = vmatmul.f32.gmra.mxu0 %v1983
  %v3727 = vpop.f32.mrf.mxu0
  %v3728 = vadd.f32 %v623, %v3727
  %3729 = vmatmul.f32.gmra.mxu0 %v1986
  %v3730 = vpop.f32.mrf.mxu0
  %v3731 = vadd.f32 %v623, %v3730
  %3732 = vmatmul.f32.gmra.mxu0 %v1989
  %v3733 = vpop.f32.mrf.mxu0
  %v3734 = vadd.f32 %v623, %v3733
  %3735 = vmatmul.f32.gmra.mxu0 %v1992
  %v3736 = vpop.f32.mrf.mxu0
  %v3737 = vadd.f32 %v623, %v3736
  %3738 = vmatmul.f32.gmra.mxu0 %v1995
  %v3739 = vpop.f32.mrf.mxu0
  %v3740 = vadd.f32 %v623, %v3739
  %3741 = vmatmul.f32.gmra.mxu0 %v1998
  %v3742 = vpop.f32.mrf.mxu0
  %v3743 = vadd.f32 %v623, %v3742
  %3744 = vmatmul.f32.gmra.mxu0 %v2001
  %v3745 = vpop.f32.mrf.mxu0
  %v3746 = vadd.f32 %v623, %v3745
  %3747 = vmatmul.f32.gmra.mxu0 %v2004
  %v3748 = vpop.f32.mrf.mxu0
  %v3749 = vadd.f32 %v623, %v3748
  %3750 = vmatmul.f32.gmra.mxu0 %v2007
  %v3751 = vpop.f32.mrf.mxu0
  %v3752 = vadd.f32 %v623, %v3751
  %3753 = vmatmul.f32.gmra.mxu0 %v2010
  %v3754 = vpop.f32.mrf.mxu0
  %v3755 = vadd.f32 %v623, %v3754
  %3756 = vmatmul.f32.gmra.mxu0 %v2013
  %v3757 = vpop.f32.mrf.mxu0
  %v3758 = vadd.f32 %v623, %v3757
  %3759 = vmatmul.f32.gmra.mxu0 %v2016
  %v3760 = vpop.f32.mrf.mxu0
  %v3761 = vadd.f32 %v623, %v3760
  %3762 = vmatmul.f32.gmra.mxu0 %v2019
  %v3763 = vpop.f32.mrf.mxu0
  %v3764 = vadd.f32 %v623, %v3763
  %3765 = vmatmul.f32.gmra.mxu0 %v2022
  %v3766 = vpop.f32.mrf.mxu0
  %v3767 = vadd.f32 %v623, %v3766
  %3768 = vmatmul.f32.gmra.mxu0 %v2025
  %v3769 = vpop.f32.mrf.mxu0
  %v3770 = vadd.f32 %v623, %v3769
  %3771 = vmatmul.f32.gmra.mxu0 %v2028
  %v3772 = vpop.f32.mrf.mxu0
  %v3773 = vadd.f32 %v623, %v3772
  %3774 = vmatmul.f32.gmra.mxu0 %v2031
  %v3775 = vpop.f32.mrf.mxu0
  %v3776 = vadd.f32 %v623, %v3775
  %3777 = vmatmul.f32.gmra.mxu0 %v2034
  %v3778 = vpop.f32.mrf.mxu0
  %v3779 = vadd.f32 %v623, %v3778
  %3780 = vmatmul.f32.gmra.mxu0 %v2037
  %v3781 = vpop.f32.mrf.mxu0
  %v3782 = vadd.f32 %v623, %v3781
  %3783 = vmatmul.f32.gmra.mxu0 %v2040
  %v3784 = vpop.f32.mrf.mxu0
  %v3785 = vadd.f32 %v623, %v3784
  %3786 = vmatmul.f32.gmra.mxu0 %v2043
  %v3787 = vpop.f32.mrf.mxu0
  %v3788 = vadd.f32 %v623, %v3787
  %3789 = vmatmul.f32.gmra.mxu0 %v2046
  %v3790 = vpop.f32.mrf.mxu0
  %v3791 = vadd.f32 %v623, %v3790
  %3792 = vmatmul.f32.gmra.mxu0 %v2049
  %v3793 = vpop.f32.mrf.mxu0
  %v3794 = vadd.f32 %v623, %v3793
  %3795 = vmatmul.f32.gmra.mxu0 %v2052
  %v3796 = vpop.f32.mrf.mxu0
  %v3797 = vadd.f32 %v623, %v3796
  %3798 = vmatmul.f32.gmra.mxu0 %v2055
  %v3799 = vpop.f32.mrf.mxu0
  %v3800 = vadd.f32 %v623, %v3799
  %3801 = vmatmul.f32.gmra.mxu0 %v2058
  %v3802 = vpop.f32.mrf.mxu0
  %v3803 = vadd.f32 %v623, %v3802
  %3804 = vmatmul.f32.gmra.mxu0 %v2061
  %v3805 = vpop.f32.mrf.mxu0
  %v3806 = vadd.f32 %v623, %v3805
  %3807 = vmatmul.f32.gmra.mxu0 %v2064
  %v3808 = vpop.f32.mrf.mxu0
  %v3809 = vadd.f32 %v623, %v3808
  %3810 = vmatmul.f32.gmra.mxu0 %v2067
  %v3811 = vpop.f32.mrf.mxu0
  %v3812 = vadd.f32 %v623, %v3811
  %3813 = vmatmul.f32.gmra.mxu0 %v2070
  %v3814 = vpop.f32.mrf.mxu0
  %v3815 = vadd.f32 %v623, %v3814
  %3816 = vmatmul.f32.gmra.mxu0 %v2073
  %v3817 = vpop.f32.mrf.mxu0
  %v3818 = vadd.f32 %v623, %v3817
  %3819 = vmatmul.f32.gmra.mxu0 %v2076
  %v3820 = vpop.f32.mrf.mxu0
  %v3821 = vadd.f32 %v623, %v3820
  %3822 = vmatmul.f32.gmra.mxu0 %v2079
  %v3823 = vpop.f32.mrf.mxu0
  %v3824 = vadd.f32 %v623, %v3823
  %3825 = vmatmul.f32.gmra.mxu0 %v2082
  %v3826 = vpop.f32.mrf.mxu0
  %v3827 = vadd.f32 %v623, %v3826
  %3828 = vmatmul.f32.gmra.mxu0 %v2085
  %v3829 = vpop.f32.mrf.mxu0
  %v3830 = vadd.f32 %v623, %v3829
  %3831 = vmatmul.f32.gmra.mxu0 %v2088
  %v3832 = vpop.f32.mrf.mxu0
  %v3833 = vadd.f32 %v623, %v3832
  %3834 = vmatmul.f32.gmra.mxu0 %v2091
  %v3835 = vpop.f32.mrf.mxu0
  %v3836 = vadd.f32 %v623, %v3835
  %3837 = vmatmul.f32.gmra.mxu0 %v2094
  %v3838 = vpop.f32.mrf.mxu0
  %v3839 = vadd.f32 %v623, %v3838
  %3840 = vmatmul.f32.gmra.mxu0 %v2097
  %v3841 = vpop.f32.mrf.mxu0
  %v3842 = vadd.f32 %v623, %v3841
  %3843 = vmatmul.f32.gmra.mxu0 %v2100
  %v3844 = vpop.f32.mrf.mxu0
  %v3845 = vadd.f32 %v623, %v3844
  %3846 = vmatmul.f32.gmra.mxu0 %v2103
  %v3847 = vpop.f32.mrf.mxu0
  %v3848 = vadd.f32 %v623, %v3847
  %3849 = vmatmul.f32.gmra.mxu0 %v2106
  %v3850 = vpop.f32.mrf.mxu0
  %v3851 = vadd.f32 %v623, %v3850
  %3852 = vmatmul.f32.gmra.mxu0 %v2109
  %v3853 = vpop.f32.mrf.mxu0
  %v3854 = vadd.f32 %v623, %v3853
  %3855 = vmatmul.f32.gmra.mxu0 %v2112
  %v3856 = vpop.f32.mrf.mxu0
  %v3857 = vadd.f32 %v623, %v3856
  %3858 = vmatmul.f32.gmra.mxu0 %v2115
  %v3859 = vpop.f32.mrf.mxu0
  %v3860 = vadd.f32 %v623, %v3859
  %3861 = vmatmul.f32.gmra.mxu0 %v2118
  %v3862 = vpop.f32.mrf.mxu0
  %v3863 = vadd.f32 %v623, %v3862
  %3864 = vmatmul.f32.gmra.mxu0 %v2121
  %v3865 = vpop.f32.mrf.mxu0
  %v3866 = vadd.f32 %v623, %v3865
  %3867 = vmatmul.f32.gmra.mxu0 %v2124
  %v3868 = vpop.f32.mrf.mxu0
  %v3869 = vadd.f32 %v623, %v3868
  %3870 = vmatmul.f32.gmra.mxu0 %v2127
  %v3871 = vpop.f32.mrf.mxu0
  %v3872 = vadd.f32 %v623, %v3871
  %3873 = vmatmul.f32.gmra.mxu0 %v2130
  %v3874 = vpop.f32.mrf.mxu0
  %v3875 = vadd.f32 %v623, %v3874
  %3876 = vmatmul.f32.gmra.mxu0 %v2133
  %v3877 = vpop.f32.mrf.mxu0
  %v3878 = vadd.f32 %v623, %v3877
  %3879 = vmatmul.f32.gmra.mxu0 %v2136
  %v3880 = vpop.f32.mrf.mxu0
  %v3881 = vadd.f32 %v623, %v3880
  %3882 = vmatmul.f32.gmra.mxu0 %v2139
  %v3883 = vpop.f32.mrf.mxu0
  %v3884 = vadd.f32 %v623, %v3883
  %3885 = vmatmul.f32.gmra.mxu0 %v2142
  %v3886 = vpop.f32.mrf.mxu0
  %v3887 = vadd.f32 %v623, %v3886
  %3888 = vmatmul.f32.gmra.mxu0 %v2145
  %v3889 = vpop.f32.mrf.mxu0
  %v3890 = vadd.f32 %v623, %v3889
  %3891 = vmatmul.f32.gmra.mxu0 %v2148
  %v3892 = vpop.f32.mrf.mxu0
  %v3893 = vadd.f32 %v623, %v3892
  %3894 = vmatmul.f32.gmra.mxu0 %v2151
  %v3895 = vpop.f32.mrf.mxu0
  %v3896 = vadd.f32 %v623, %v3895
  %3897 = vmatmul.f32.gmra.mxu0 %v2154
  %v3898 = vpop.f32.mrf.mxu0
  %v3899 = vadd.f32 %v623, %v3898
  %3900 = vmatmul.f32.gmra.mxu0 %v2157
  %v3901 = vpop.f32.mrf.mxu0
  %v3902 = vadd.f32 %v623, %v3901
  %3903 = vmatmul.f32.gmra.mxu0 %v2160
  %v3904 = vpop.f32.mrf.mxu0
  %v3905 = vadd.f32 %v623, %v3904
  %3906 = vmatmul.f32.gmra.mxu0 %v2163
  %v3907 = vpop.f32.mrf.mxu0
  %v3908 = vadd.f32 %v623, %v3907
  %3909 = vmatmul.f32.gmra.mxu0 %v2166
  %v3910 = vpop.f32.mrf.mxu0
  %v3911 = vadd.f32 %v623, %v3910
  %3912 = vmatmul.f32.gmra.mxu0 %v2169
  %v3913 = vpop.f32.mrf.mxu0
  %v3914 = vadd.f32 %v623, %v3913
  %3915 = vmatmul.f32.gmra.mxu0 %v2172
  %v3916 = vpop.f32.mrf.mxu0
  %v3917 = vadd.f32 %v623, %v3916
  %3918 = vmatmul.f32.gmra.mxu0 %v2175
  %v3919 = vpop.f32.mrf.mxu0
  %v3920 = vadd.f32 %v623, %v3919
  %3921 = vmatmul.f32.gmra.mxu0 %v2178
  %v3922 = vpop.f32.mrf.mxu0
  %v3923 = vadd.f32 %v623, %v3922
  %3924 = vmatmul.f32.gmra.mxu0 %v2181
  %v3925 = vpop.f32.mrf.mxu0
  %v3926 = vadd.f32 %v623, %v3925
  %3927 = vmatmul.f32.gmra.mxu0 %v2184
  %v3928 = vpop.f32.mrf.mxu0
  %v3929 = vadd.f32 %v623, %v3928
  %3930 = vmatmul.f32.gmra.mxu0 %v2187
  %v3931 = vpop.f32.mrf.mxu0
  %v3932 = vadd.f32 %v623, %v3931
  %3933 = vmatmul.f32.gmra.mxu0 %v2190
  %v3934 = vpop.f32.mrf.mxu0
  %v3935 = vadd.f32 %v623, %v3934
  %3936 = vmatmul.f32.gmra.mxu0 %v2193
  %v3937 = vpop.f32.mrf.mxu0
  %v3938 = vadd.f32 %v623, %v3937
  %3939 = vmatmul.f32.gmra.mxu0 %v2196
  %v3940 = vpop.f32.mrf.mxu0
  %v3941 = vadd.f32 %v623, %v3940
  %3942 = vmatmul.f32.gmra.mxu0 %v2199
  %v3943 = vpop.f32.mrf.mxu0
  %v3944 = vadd.f32 %v623, %v3943
  %3945 = vmatmul.f32.gmra.mxu0 %v2202
  %v3946 = vpop.f32.mrf.mxu0
  %v3947 = vadd.f32 %v623, %v3946
  %3948 = vmatmul.f32.gmra.mxu0 %v2205
  %v3949 = vpop.f32.mrf.mxu0
  %v3950 = vadd.f32 %v623, %v3949
  %3951 = vmatmul.f32.gmra.mxu0 %v2208
  %v3952 = vpop.f32.mrf.mxu0
  %v3953 = vadd.f32 %v623, %v3952
  %3954 = vmatmul.f32.gmra.mxu0 %v2211
  %v3955 = vpop.f32.mrf.mxu0
  %v3956 = vadd.f32 %v623, %v3955
  %3957 = vmatmul.f32.gmra.mxu0 %v2214
  %v3958 = vpop.f32.mrf.mxu0
  %v3959 = vadd.f32 %v623, %v3958
  %3960 = vmatmul.f32.gmra.mxu0 %v2217
  %v3961 = vpop.f32.mrf.mxu0
  %v3962 = vadd.f32 %v623, %v3961
  %3963 = vmatmul.f32.gmra.mxu0 %v2220
  %v3964 = vpop.f32.mrf.mxu0
  %v3965 = vadd.f32 %v623, %v3964
  %3966 = vmatmul.f32.gmra.mxu0 %v2223
  %v3967 = vpop.f32.mrf.mxu0
  %v3968 = vadd.f32 %v623, %v3967
  %3969 = vmatmul.f32.gmra.mxu0 %v2226
  %v3970 = vpop.f32.mrf.mxu0
  %v3971 = vadd.f32 %v623, %v3970
  %3972 = vmatmul.f32.gmra.mxu0 %v2229
  %v3973 = vpop.f32.mrf.mxu0
  %v3974 = vadd.f32 %v623, %v3973
  %3975 = vmatmul.f32.gmra.mxu0 %v2232
  %v3976 = vpop.f32.mrf.mxu0
  %v3977 = vadd.f32 %v623, %v3976
  %3978 = vmatmul.f32.gmra.mxu0 %v2235
  %v3979 = vpop.f32.mrf.mxu0
  %v3980 = vadd.f32 %v623, %v3979
  %3981 = vmatmul.f32.gmra.mxu0 %v2238
  %v3982 = vpop.f32.mrf.mxu0
  %v3983 = vadd.f32 %v623, %v3982
  %3984 = vmatmul.f32.gmra.mxu0 %v2241
  %v3985 = vpop.f32.mrf.mxu0
  %v3986 = vadd.f32 %v623, %v3985
  %3987 = vmatmul.f32.gmra.mxu0 %v2244
  %v3988 = vpop.f32.mrf.mxu0
  %v3989 = vadd.f32 %v623, %v3988
  %3990 = vmatmul.f32.gmra.mxu0 %v2247
  %v3991 = vpop.f32.mrf.mxu0
  %v3992 = vadd.f32 %v623, %v3991
  %3993 = vmatmul.f32.gmra.mxu0 %v2250
  %v3994 = vpop.f32.mrf.mxu0
  %v3995 = vadd.f32 %v623, %v3994
  %3996 = vmatmul.f32.gmra.mxu0 %v2253
  %v3997 = vpop.f32.mrf.mxu0
  %v3998 = vadd.f32 %v623, %v3997
  %3999 = vmatmul.f32.gmra.mxu0 %v2256
  %v4000 = vpop.f32.mrf.mxu0
  %v4001 = vadd.f32 %v623, %v4000
  %4002 = vmatmul.f32.gmra.mxu0 %v2259
  %v4003 = vpop.f32.mrf.mxu0
  %v4004 = vadd.f32 %v623, %v4003
  %4005 = vmatmul.f32.gmra.mxu0 %v2262
  %v4006 = vpop.f32.mrf.mxu0
  %v4007 = vadd.f32 %v623, %v4006
  %4008 = vmatmul.f32.gmra.mxu0 %v2265
  %v4009 = vpop.f32.mrf.mxu0
  %v4010 = vadd.f32 %v623, %v4009
  %4011 = vmatmul.f32.gmra.mxu0 %v2268
  %v4012 = vpop.f32.mrf.mxu0
  %v4013 = vadd.f32 %v623, %v4012
  %4014 = vmatmul.f32.gmra.mxu0 %v2271
  %v4015 = vpop.f32.mrf.mxu0
  %v4016 = vadd.f32 %v623, %v4015
  %4017 = vmatmul.f32.gmra.mxu0 %v2274
  %v4018 = vpop.f32.mrf.mxu0
  %v4019 = vadd.f32 %v623, %v4018
  %4020 = vmatmul.f32.gmra.mxu0 %v2277
  %v4021 = vpop.f32.mrf.mxu0
  %v4022 = vadd.f32 %v623, %v4021
  %4023 = vmatmul.f32.gmra.mxu0 %v2280
  %v4024 = vpop.f32.mrf.mxu0
  %v4025 = vadd.f32 %v623, %v4024
  %4026 = vmatmul.f32.gmra.mxu0 %v2283
  %v4027 = vpop.f32.mrf.mxu0
  %v4028 = vadd.f32 %v623, %v4027
  %4029 = vmatmul.f32.gmra.mxu0 %v2286
  %v4030 = vpop.f32.mrf.mxu0
  %v4031 = vadd.f32 %v623, %v4030
  %4032 = vmatmul.f32.gmra.mxu0 %v2289
  %v4033 = vpop.f32.mrf.mxu0
  %v4034 = vadd.f32 %v623, %v4033
  %4035 = vmatmul.f32.gmra.mxu0 %v2292
  %v4036 = vpop.f32.mrf.mxu0
  %v4037 = vadd.f32 %v623, %v4036
  %4038 = vmatmul.f32.gmra.mxu0 %v2295
  %v4039 = vpop.f32.mrf.mxu0
  %v4040 = vadd.f32 %v623, %v4039
  %4041 = vmatmul.f32.gmra.mxu0 %v2298
  %v4042 = vpop.f32.mrf.mxu0
  %v4043 = vadd.f32 %v623, %v4042
  %4044 = vmatmul.f32.gmra.mxu0 %v2301
  %v4045 = vpop.f32.mrf.mxu0
  %v4046 = vadd.f32 %v623, %v4045
  %4047 = vmatmul.f32.gmra.mxu0 %v2304
  %v4048 = vpop.f32.mrf.mxu0
  %v4049 = vadd.f32 %v623, %v4048
  %4050 = vmatmul.f32.gmra.mxu0 %v2307
  %v4051 = vpop.f32.mrf.mxu0
  %v4052 = vadd.f32 %v623, %v4051
  %4053 = vmatmul.f32.gmra.mxu0 %v2310
  %v4054 = vpop.f32.mrf.mxu0
  %v4055 = vadd.f32 %v623, %v4054
  %4056 = vmatmul.f32.gmra.mxu0 %v2313
  %v4057 = vpop.f32.mrf.mxu0
  %v4058 = vadd.f32 %v623, %v4057
  %4059 = vmatmul.f32.gmra.mxu0 %v2316
  %v4060 = vpop.f32.mrf.mxu0
  %v4061 = vadd.f32 %v623, %v4060
  %4062 = vmatmul.f32.gmra.mxu0 %v2319
  %v4063 = vpop.f32.mrf.mxu0
  %v4064 = vadd.f32 %v623, %v4063
  %4065 = vmatmul.f32.gmra.mxu0 %v2322
  %v4066 = vpop.f32.mrf.mxu0
  %v4067 = vadd.f32 %v623, %v4066
  %4068 = vmatmul.f32.gmra.mxu0 %v2325
  %v4069 = vpop.f32.mrf.mxu0
  %v4070 = vadd.f32 %v623, %v4069
  %4071 = vmatmul.f32.gmra.mxu0 %v2328
  %v4072 = vpop.f32.mrf.mxu0
  %v4073 = vadd.f32 %v623, %v4072
  %4074 = vmatmul.f32.gmra.mxu0 %v2331
  %v4075 = vpop.f32.mrf.mxu0
  %v4076 = vadd.f32 %v623, %v4075
  %4077 = vmatmul.f32.gmra.mxu0 %v2334
  %v4078 = vpop.f32.mrf.mxu0
  %v4079 = vadd.f32 %v623, %v4078
  %4080 = vmatmul.f32.gmra.mxu0 %v2337
  %v4081 = vpop.f32.mrf.mxu0
  %v4082 = vadd.f32 %v623, %v4081
  %4083 = vmatmul.f32.gmra.mxu0 %v2340
  %v4084 = vpop.f32.mrf.mxu0
  %v4085 = vadd.f32 %v623, %v4084
  %4086 = vmatmul.f32.gmra.mxu0 %v2343
  %v4087 = vpop.f32.mrf.mxu0
  %v4088 = vadd.f32 %v623, %v4087
  %4089 = vmatmul.f32.gmra.mxu0 %v2346
  %v4090 = vpop.f32.mrf.mxu0
  %v4091 = vadd.f32 %v623, %v4090
  %4092 = vmatmul.f32.gmra.mxu0 %v2349
  %v4093 = vpop.f32.mrf.mxu0
  %v4094 = vadd.f32 %v623, %v4093
  %4095 = vmatmul.f32.gmra.mxu0 %v2352
  %v4096 = vpop.f32.mrf.mxu0
  %v4097 = vadd.f32 %v623, %v4096
  %4098 = vdwg.mxu0
  %v4099 = vmax.f32 %v2372, 0.0
  %v4100 = vmax.f32 %v2375, 0.0
  %v4101 = vmax.f32 %v2378, 0.0
  %v4102 = vmax.f32 %v2381, 0.0
  %v4103 = vmax.f32 %v2384, 0.0
  %v4104 = vmax.f32 %v2387, 0.0
  %v4105 = vmax.f32 %v2390, 0.0
  %v4106 = vmax.f32 %v2393, 0.0
  %v4107 = vmax.f32 %v2396, 0.0
  %v4108 = vmax.f32 %v2399, 0.0
  %v4109 = vmax.f32 %v2402, 0.0
  %v4110 = vmax.f32 %v2405, 0.0
  %v4111 = vmax.f32 %v2408, 0.0
  %v4112 = vmax.f32 %v2411, 0.0
  %v4113 = vmax.f32 %v2414, 0.0
  %v4114 = vmax.f32 %v2417, 0.0
  %v4115 = vmax.f32 %v2420, 0.0
  %v4116 = vmax.f32 %v2423, 0.0
  %v4117 = vmax.f32 %v2426, 0.0
  %v4118 = vmax.f32 %v2429, 0.0
  %v4119 = vmax.f32 %v2432, 0.0
  %v4120 = vmax.f32 %v2435, 0.0
  %v4121 = vmax.f32 %v2438, 0.0
  %v4122 = vmax.f32 %v2441, 0.0
  %v4123 = vmax.f32 %v2444, 0.0
  %v4124 = vmax.f32 %v2447, 0.0
  %v4125 = vmax.f32 %v2450, 0.0
  %v4126 = vmax.f32 %v2453, 0.0
  %v4127 = vmax.f32 %v2456, 0.0
  %v4128 = vmax.f32 %v2459, 0.0
  %v4129 = vmax.f32 %v2462, 0.0
  %v4130 = vmax.f32 %v2465, 0.0
  %v4131 = vmax.f32 %v2468, 0.0
  %v4132 = vmax.f32 %v2471, 0.0
  %v4133 = vmax.f32 %v2474, 0.0
  %v4134 = vmax.f32 %v2477, 0.0
  %v4135 = vmax.f32 %v2480, 0.0
  %v4136 = vmax.f32 %v2483, 0.0
  %v4137 = vmax.f32 %v2486, 0.0
  %v4138 = vmax.f32 %v2489, 0.0
  %v4139 = vmax.f32 %v2492, 0.0
  %v4140 = vmax.f32 %v2495, 0.0
  %v4141 = vmax.f32 %v2498, 0.0
  %v4142 = vmax.f32 %v2501, 0.0
  %v4143 = vmax.f32 %v2504, 0.0
  %v4144 = vmax.f32 %v2507, 0.0
  %v4145 = vmax.f32 %v2510, 0.0
  %v4146 = vmax.f32 %v2513, 0.0
  %v4147 = vmax.f32 %v2516, 0.0
  %v4148 = vmax.f32 %v2519, 0.0
  %v4149 = vmax.f32 %v2522, 0.0
  %v4150 = vmax.f32 %v2525, 0.0
  %v4151 = vmax.f32 %v2528, 0.0
  %v4152 = vmax.f32 %v2531, 0.0
  %v4153 = vmax.f32 %v2534, 0.0
  %v4154 = vmax.f32 %v2537, 0.0
  %v4155 = vmax.f32 %v2540, 0.0
  %v4156 = vmax.f32 %v2543, 0.0
  %v4157 = vmax.f32 %v2546, 0.0
  %v4158 = vmax.f32 %v2549, 0.0
  %v4159 = vmax.f32 %v2552, 0.0
  %v4160 = vmax.f32 %v2555, 0.0
  %v4161 = vmax.f32 %v2558, 0.0
  %v4162 = vmax.f32 %v2561, 0.0
  %v4163 = vmax.f32 %v2564, 0.0
  %v4164 = vmax.f32 %v2567, 0.0
  %v4165 = vmax.f32 %v2570, 0.0
  %v4166 = vmax.f32 %v2573, 0.0
  %v4167 = vmax.f32 %v2576, 0.0
  %v4168 = vmax.f32 %v2579, 0.0
  %v4169 = vmax.f32 %v2582, 0.0
  %v4170 = vmax.f32 %v2585, 0.0
  %v4171 = vmax.f32 %v2588, 0.0
  %v4172 = vmax.f32 %v2591, 0.0
  %v4173 = vmax.f32 %v2594, 0.0
  %v4174 = vmax.f32 %v2597, 0.0
  %v4175 = vmax.f32 %v2600, 0.0
  %v4176 = vmax.f32 %v2603, 0.0
  %v4177 = vmax.f32 %v2606, 0.0
  %v4178 = vmax.f32 %v2609, 0.0
  %v4179 = vmax.f32 %v2612, 0.0
  %v4180 = vmax.f32 %v2615, 0.0
  %v4181 = vmax.f32 %v2618, 0.0
  %v4182 = vmax.f32 %v2621, 0.0
  %v4183 = vmax.f32 %v2624, 0.0
  %v4184 = vmax.f32 %v2627, 0.0
  %v4185 = vmax.f32 %v2630, 0.0
  %v4186 = vmax.f32 %v2633, 0.0
  %v4187 = vmax.f32 %v2636, 0.0
  %v4188 = vmax.f32 %v2639, 0.0
  %v4189 = vmax.f32 %v2642, 0.0
  %v4190 = vmax.f32 %v2645, 0.0
  %v4191 = vmax.f32 %v2648, 0.0
  %v4192 = vmax.f32 %v2651, 0.0
  %v4193 = vmax.f32 %v2654, 0.0
  %v4194 = vmax.f32 %v2657, 0.0
  %v4195 = vmax.f32 %v2660, 0.0
  %v4196 = vmax.f32 %v2663, 0.0
  %v4197 = vmax.f32 %v2666, 0.0
  %v4198 = vmax.f32 %v2669, 0.0
  %v4199 = vmax.f32 %v2672, 0.0
  %v4200 = vmax.f32 %v2675, 0.0
  %v4201 = vmax.f32 %v2678, 0.0
  %v4202 = vmax.f32 %v2681, 0.0
  %v4203 = vmax.f32 %v2684, 0.0
  %v4204 = vmax.f32 %v2687, 0.0
  %v4205 = vmax.f32 %v2690, 0.0
  %v4206 = vmax.f32 %v2693, 0.0
  %v4207 = vmax.f32 %v2696, 0.0
  %v4208 = vmax.f32 %v2699, 0.0
  %v4209 = vmax.f32 %v2702, 0.0
  %v4210 = vmax.f32 %v2705, 0.0
  %v4211 = vmax.f32 %v2708, 0.0
  %v4212 = vmax.f32 %v2711, 0.0
  %v4213 = vmax.f32 %v2714, 0.0
  %v4214 = vmax.f32 %v2717, 0.0
  %v4215 = vmax.f32 %v2720, 0.0
  %v4216 = vmax.f32 %v2723, 0.0
  %v4217 = vmax.f32 %v2726, 0.0
  %v4218 = vmax.f32 %v2729, 0.0
  %v4219 = vmax.f32 %v2732, 0.0
  %v4220 = vmax.f32 %v2735, 0.0
  %v4221 = vmax.f32 %v2738, 0.0
  %v4222 = vmax.f32 %v2741, 0.0
  %v4223 = vmax.f32 %v2744, 0.0
  %v4224 = vmax.f32 %v2747, 0.0
  %v4225 = vmax.f32 %v2750, 0.0
  %v4226 = vmax.f32 %v2753, 0.0
  %v4227 = vmax.f32 %v2756, 0.0
  %v4228 = vmax.f32 %v2759, 0.0
  %v4229 = vmax.f32 %v2762, 0.0
  %v4230 = vmax.f32 %v2765, 0.0
  %v4231 = vmax.f32 %v2768, 0.0
  %v4232 = vmax.f32 %v2771, 0.0
  %v4233 = vmax.f32 %v2774, 0.0
  %v4234 = vmax.f32 %v2777, 0.0
  %v4235 = vmax.f32 %v2780, 0.0
  %v4236 = vmax.f32 %v2783, 0.0
  %v4237 = vmax.f32 %v2786, 0.0
  %v4238 = vmax.f32 %v2789, 0.0
  %v4239 = vmax.f32 %v2792, 0.0
  %v4240 = vmax.f32 %v2795, 0.0
  %v4241 = vmax.f32 %v2798, 0.0
  %v4242 = vmax.f32 %v2801, 0.0
  %v4243 = vmax.f32 %v2804, 0.0
  %v4244 = vmax.f32 %v2807, 0.0
  %v4245 = vmax.f32 %v2810, 0.0
  %v4246 = vmax.f32 %v2813, 0.0
  %v4247 = vmax.f32 %v2816, 0.0
  %v4248 = vmax.f32 %v2819, 0.0
  %v4249 = vmax.f32 %v2822, 0.0
  %v4250 = vmax.f32 %v2825, 0.0
  %v4251 = vmax.f32 %v2828, 0.0
  %v4252 = vmax.f32 %v2831, 0.0
  %v4253 = vmax.f32 %v2834, 0.0
  %v4254 = vmax.f32 %v2837, 0.0
  %v4255 = vmax.f32 %v2840, 0.0
  %v4256 = vmax.f32 %v2843, 0.0
  %v4257 = vmax.f32 %v2846, 0.0
  %v4258 = vmax.f32 %v2849, 0.0
  %v4259 = vmax.f32 %v2852, 0.0
  %v4260 = vmax.f32 %v2855, 0.0
  %v4261 = vmax.f32 %v2858, 0.0
  %v4262 = vmax.f32 %v2861, 0.0
  %v4263 = vmax.f32 %v2864, 0.0
  %v4264 = vmax.f32 %v2867, 0.0
  %v4265 = vmax.f32 %v2870, 0.0
  %v4266 = vmax.f32 %v2873, 0.0
  %v4267 = vmax.f32 %v2876, 0.0
  %v4268 = vmax.f32 %v2879, 0.0
  %v4269 = vmax.f32 %v2882, 0.0
  %v4270 = vmax.f32 %v2885, 0.0
  %v4271 = vmax.f32 %v2888, 0.0
  %v4272 = vmax.f32 %v2891, 0.0
  %v4273 = vmax.f32 %v2894, 0.0
  %v4274 = vmax.f32 %v2897, 0.0
  %v4275 = vmax.f32 %v2900, 0.0
  %v4276 = vmax.f32 %v2903, 0.0
  %v4277 = vmax.f32 %v2906, 0.0
  %v4278 = vmax.f32 %v2909, 0.0
  %v4279 = vmax.f32 %v2912, 0.0
  %v4280 = vmax.f32 %v2915, 0.0
  %v4281 = vmax.f32 %v2918, 0.0
  %v4282 = vmax.f32 %v2921, 0.0
  %v4283 = vmax.f32 %v2924, 0.0
  %v4284 = vmax.f32 %v2927, 0.0
  %v4285 = vmax.f32 %v2930, 0.0
  %v4286 = vmax.f32 %v2933, 0.0
  %v4287 = vmax.f32 %v2936, 0.0
  %v4288 = vmax.f32 %v2939, 0.0
  %v4289 = vmax.f32 %v2942, 0.0
  %v4290 = vmax.f32 %v2945, 0.0
  %v4291 = vmax.f32 %v2948, 0.0
  %v4292 = vmax.f32 %v2951, 0.0
  %v4293 = vmax.f32 %v2954, 0.0
  %v4294 = vmax.f32 %v2957, 0.0
  %v4295 = vmax.f32 %v2960, 0.0
  %v4296 = vmax.f32 %v2963, 0.0
  %v4297 = vmax.f32 %v2966, 0.0
  %v4298 = vmax.f32 %v2969, 0.0
  %v4299 = vmax.f32 %v2972, 0.0
  %v4300 = vmax.f32 %v2975, 0.0
  %v4301 = vmax.f32 %v2978, 0.0
  %v4302 = vmax.f32 %v2981, 0.0
  %v4303 = vmax.f32 %v2984, 0.0
  %v4304 = vmax.f32 %v2987, 0.0
  %v4305 = vmax.f32 %v2990, 0.0
  %v4306 = vmax.f32 %v2993, 0.0
  %v4307 = vmax.f32 %v2996, 0.0
  %v4308 = vmax.f32 %v2999, 0.0
  %v4309 = vmax.f32 %v3002, 0.0
  %v4310 = vmax.f32 %v3005, 0.0
  %v4311 = vmax.f32 %v3008, 0.0
  %v4312 = vmax.f32 %v3011, 0.0
  %v4313 = vmax.f32 %v3014, 0.0
  %v4314 = vmax.f32 %v3017, 0.0
  %v4315 = vmax.f32 %v3020, 0.0
  %v4316 = vmax.f32 %v3023, 0.0
  %v4317 = vmax.f32 %v3026, 0.0
  %v4318 = vmax.f32 %v3029, 0.0
  %v4319 = vmax.f32 %v3032, 0.0
  %v4320 = vmax.f32 %v3035, 0.0
  %v4321 = vmax.f32 %v3038, 0.0
  %v4322 = vmax.f32 %v3041, 0.0
  %v4323 = vmax.f32 %v3044, 0.0
  %v4324 = vmax.f32 %v3047, 0.0
  %v4325 = vmax.f32 %v3050, 0.0
  %v4326 = vmax.f32 %v3053, 0.0
  %v4327 = vmax.f32 %v3056, 0.0
  %v4328 = vmax.f32 %v3059, 0.0
  %v4329 = vmax.f32 %v3062, 0.0
  %v4330 = vmax.f32 %v3065, 0.0
  %v4331 = vmax.f32 %v3068, 0.0
  %v4332 = vmax.f32 %v3071, 0.0
  %v4333 = vmax.f32 %v3074, 0.0
  %v4334 = vmax.f32 %v3077, 0.0
  %v4335 = vmax.f32 %v3080, 0.0
  %v4336 = vmax.f32 %v3083, 0.0
  %v4337 = vmax.f32 %v3086, 0.0
  %v4338 = vmax.f32 %v3089, 0.0
  %v4339 = vmax.f32 %v3092, 0.0
  %v4340 = vmax.f32 %v3095, 0.0
  %v4341 = vmax.f32 %v3098, 0.0
  %v4342 = vmax.f32 %v3101, 0.0
  %v4343 = vmax.f32 %v3104, 0.0
  %v4344 = vmax.f32 %v3107, 0.0
  %v4345 = vmax.f32 %v3110, 0.0
  %v4346 = vmax.f32 %v3113, 0.0
  %v4347 = vmax.f32 %v3116, 0.0
  %v4348 = vmax.f32 %v3119, 0.0
  %v4349 = vmax.f32 %v3122, 0.0
  %v4350 = vmax.f32 %v3125, 0.0
  %v4351 = vmax.f32 %v3128, 0.0
  %v4352 = vmax.f32 %v3131, 0.0
  %v4353 = vmax.f32 %v3134, 0.0
  %v4354 = vmax.f32 %v3137, 0.0
  %v4355 = vmax.f32 %v3140, 0.0
  %v4356 = vmax.f32 %v3143, 0.0
  %v4357 = vmax.f32 %v3146, 0.0
  %v4358 = vmax.f32 %v3149, 0.0
  %v4359 = vmax.f32 %v3152, 0.0
  %v4360 = vmax.f32 %v3155, 0.0
  %v4361 = vmax.f32 %v3158, 0.0
  %v4362 = vmax.f32 %v3161, 0.0
  %v4363 = vmax.f32 %v3164, 0.0
  %v4364 = vmax.f32 %v3167, 0.0
  %v4365 = vmax.f32 %v3170, 0.0
  %v4366 = vmax.f32 %v3173, 0.0
  %v4367 = vmax.f32 %v3176, 0.0
  %v4368 = vmax.f32 %v3179, 0.0
  %v4369 = vmax.f32 %v3182, 0.0
  %v4370 = vmax.f32 %v3185, 0.0
  %v4371 = vmax.f32 %v3188, 0.0
  %v4372 = vmax.f32 %v3191, 0.0
  %v4373 = vmax.f32 %v3194, 0.0
  %v4374 = vmax.f32 %v3197, 0.0
  %v4375 = vmax.f32 %v3200, 0.0
  %v4376 = vmax.f32 %v3203, 0.0
  %v4377 = vmax.f32 %v3206, 0.0
  %v4378 = vmax.f32 %v3209, 0.0
  %v4379 = vmax.f32 %v3212, 0.0
  %v4380 = vmax.f32 %v3215, 0.0
  %v4381 = vmax.f32 %v3218, 0.0
  %v4382 = vmax.f32 %v3221, 0.0
  %v4383 = vmax.f32 %v3224, 0.0
  %v4384 = vmax.f32 %v3227, 0.0
  %v4385 = vmax.f32 %v3230, 0.0
  %v4386 = vmax.f32 %v3233, 0.0
  %v4387 = vmax.f32 %v3236, 0.0
  %v4388 = vmax.f32 %v3239, 0.0
  %v4389 = vmax.f32 %v3242, 0.0
  %v4390 = vmax.f32 %v3245, 0.0
  %v4391 = vmax.f32 %v3248, 0.0
  %v4392 = vmax.f32 %v3251, 0.0
  %v4393 = vmax.f32 %v3254, 0.0
  %v4394 = vmax.f32 %v3257, 0.0
  %v4395 = vmax.f32 %v3260, 0.0
  %v4396 = vmax.f32 %v3263, 0.0
  %v4397 = vmax.f32 %v3266, 0.0
  %v4398 = vmax.f32 %v3269, 0.0
  %v4399 = vmax.f32 %v3272, 0.0
  %v4400 = vmax.f32 %v3275, 0.0
  %v4401 = vmax.f32 %v3278, 0.0
  %v4402 = vmax.f32 %v3281, 0.0
  %v4403 = vmax.f32 %v3284, 0.0
  %v4404 = vmax.f32 %v3287, 0.0
  %v4405 = vmax.f32 %v3290, 0.0
  %v4406 = vmax.f32 %v3293, 0.0
  %v4407 = vmax.f32 %v3296, 0.0
  %v4408 = vmax.f32 %v3299, 0.0
  %v4409 = vmax.f32 %v3302, 0.0
  %v4410 = vmax.f32 %v3305, 0.0
  %v4411 = vmax.f32 %v3308, 0.0
  %v4412 = vmax.f32 %v3311, 0.0
  %v4413 = vmax.f32 %v3314, 0.0
  %v4414 = vmax.f32 %v3317, 0.0
  %v4415 = vmax.f32 %v3320, 0.0
  %v4416 = vmax.f32 %v3323, 0.0
  %v4417 = vmax.f32 %v3326, 0.0
  %v4418 = vmax.f32 %v3329, 0.0
  %v4419 = vmax.f32 %v3332, 0.0
  %v4420 = vmax.f32 %v3335, 0.0
  %v4421 = vmax.f32 %v3338, 0.0
  %v4422 = vmax.f32 %v3341, 0.0
  %v4423 = vmax.f32 %v3344, 0.0
  %v4424 = vmax.f32 %v3347, 0.0
  %v4425 = vmax.f32 %v3350, 0.0
  %v4426 = vmax.f32 %v3353, 0.0
  %v4427 = vmax.f32 %v3356, 0.0
  %v4428 = vmax.f32 %v3359, 0.0
  %v4429 = vmax.f32 %v3362, 0.0
  %v4430 = vmax.f32 %v3365, 0.0
  %v4431 = vmax.f32 %v3368, 0.0
  %v4432 = vmax.f32 %v3371, 0.0
  %v4433 = vmax.f32 %v3374, 0.0
  %v4434 = vmax.f32 %v3377, 0.0
  %v4435 = vmax.f32 %v3380, 0.0
  %v4436 = vmax.f32 %v3383, 0.0
  %v4437 = vmax.f32 %v3386, 0.0
  %v4438 = vmax.f32 %v3389, 0.0
  %v4439 = vmax.f32 %v3392, 0.0
  %v4440 = vmax.f32 %v3395, 0.0
  %v4441 = vmax.f32 %v3398, 0.0
  %v4442 = vmax.f32 %v3401, 0.0
  %v4443 = vmax.f32 %v3404, 0.0
  %v4444 = vmax.f32 %v3407, 0.0
  %v4445 = vmax.f32 %v3410, 0.0
  %v4446 = vmax.f32 %v3413, 0.0
  %v4447 = vmax.f32 %v3416, 0.0
  %v4448 = vmax.f32 %v3419, 0.0
  %v4449 = vmax.f32 %v3422, 0.0
  %v4450 = vmax.f32 %v3425, 0.0
  %v4451 = vmax.f32 %v3428, 0.0
  %v4452 = vmax.f32 %v3431, 0.0
  %v4453 = vmax.f32 %v3434, 0.0
  %v4454 = vmax.f32 %v3437, 0.0
  %v4455 = vmax.f32 %v3440, 0.0
  %v4456 = vmax.f32 %v3443, 0.0
  %v4457 = vmax.f32 %v3446, 0.0
  %v4458 = vmax.f32 %v3449, 0.0
  %v4459 = vmax.f32 %v3452, 0.0
  %v4460 = vmax.f32 %v3455, 0.0
  %v4461 = vmax.f32 %v3458, 0.0
  %v4462 = vmax.f32 %v3461, 0.0
  %v4463 = vmax.f32 %v3464, 0.0
  %v4464 = vmax.f32 %v3467, 0.0
  %v4465 = vmax.f32 %v3470, 0.0
  %v4466 = vmax.f32 %v3473, 0.0
  %v4467 = vmax.f32 %v3476, 0.0
  %v4468 = vmax.f32 %v3479, 0.0
  %v4469 = vmax.f32 %v3482, 0.0
  %v4470 = vmax.f32 %v3485, 0.0
  %v4471 = vmax.f32 %v3488, 0.0
  %v4472 = vmax.f32 %v3491, 0.0
  %v4473 = vmax.f32 %v3494, 0.0
  %v4474 = vmax.f32 %v3497, 0.0
  %v4475 = vmax.f32 %v3500, 0.0
  %v4476 = vmax.f32 %v3503, 0.0
  %v4477 = vmax.f32 %v3506, 0.0
  %v4478 = vmax.f32 %v3509, 0.0
  %v4479 = vmax.f32 %v3512, 0.0
  %v4480 = vmax.f32 %v3515, 0.0
  %v4481 = vmax.f32 %v3518, 0.0
  %v4482 = vmax.f32 %v3521, 0.0
  %v4483 = vmax.f32 %v3524, 0.0
  %v4484 = vmax.f32 %v3527, 0.0
  %v4485 = vmax.f32 %v3530, 0.0
  %v4486 = vmax.f32 %v3533, 0.0
  %v4487 = vmax.f32 %v3536, 0.0
  %v4488 = vmax.f32 %v3539, 0.0
  %v4489 = vmax.f32 %v3542, 0.0
  %v4490 = vmax.f32 %v3545, 0.0
  %v4491 = vmax.f32 %v3548, 0.0
  %v4492 = vmax.f32 %v3551, 0.0
  %v4493 = vmax.f32 %v3554, 0.0
  %v4494 = vmax.f32 %v3557, 0.0
  %v4495 = vmax.f32 %v3560, 0.0
  %v4496 = vmax.f32 %v3563, 0.0
  %v4497 = vmax.f32 %v3566, 0.0
  %v4498 = vmax.f32 %v3569, 0.0
  %v4499 = vmax.f32 %v3572, 0.0
  %v4500 = vmax.f32 %v3575, 0.0
  %v4501 = vmax.f32 %v3578, 0.0
  %v4502 = vmax.f32 %v3581, 0.0
  %v4503 = vmax.f32 %v3584, 0.0
  %v4504 = vmax.f32 %v3587, 0.0
  %v4505 = vmax.f32 %v3590, 0.0
  %v4506 = vmax.f32 %v3593, 0.0
  %v4507 = vmax.f32 %v3596, 0.0
  %v4508 = vmax.f32 %v3599, 0.0
  %v4509 = vmax.f32 %v3602, 0.0
  %v4510 = vmax.f32 %v3605, 0.0
  %v4511 = vmax.f32 %v3608, 0.0
  %v4512 = vmax.f32 %v3611, 0.0
  %v4513 = vmax.f32 %v3614, 0.0
  %v4514 = vmax.f32 %v3617, 0.0
  %v4515 = vmax.f32 %v3620, 0.0
  %v4516 = vmax.f32 %v3623, 0.0
  %v4517 = vmax.f32 %v3626, 0.0
  %v4518 = vmax.f32 %v3629, 0.0
  %v4519 = vmax.f32 %v3632, 0.0
  %v4520 = vmax.f32 %v3635, 0.0
  %v4521 = vmax.f32 %v3638, 0.0
  %v4522 = vmax.f32 %v3641, 0.0
  %v4523 = vmax.f32 %v3644, 0.0
  %v4524 = vmax.f32 %v3647, 0.0
  %v4525 = vmax.f32 %v3650, 0.0
  %v4526 = vmax.f32 %v3653, 0.0
  %v4527 = vmax.f32 %v3656, 0.0
  %v4528 = vmax.f32 %v3659, 0.0
  %v4529 = vmax.f32 %v3662, 0.0
  %v4530 = vmax.f32 %v3665, 0.0
  %v4531 = vmax.f32 %v3668, 0.0
  %v4532 = vmax.f32 %v3671, 0.0
  %v4533 = vmax.f32 %v3674, 0.0
  %v4534 = vmax.f32 %v3677, 0.0
  %v4535 = vmax.f32 %v3680, 0.0
  %v4536 = vmax.f32 %v3683, 0.0
  %v4537 = vmax.f32 %v3686, 0.0
  %v4538 = vmax.f32 %v3689, 0.0
  %v4539 = vmax.f32 %v3692, 0.0
  %v4540 = vmax.f32 %v3695, 0.0
  %v4541 = vmax.f32 %v3698, 0.0
  %v4542 = vmax.f32 %v3701, 0.0
  %v4543 = vmax.f32 %v3704, 0.0
  %v4544 = vmax.f32 %v3707, 0.0
  %v4545 = vmax.f32 %v3710, 0.0
  %v4546 = vmax.f32 %v3713, 0.0
  %v4547 = vmax.f32 %v3716, 0.0
  %v4548 = vmax.f32 %v3719, 0.0
  %v4549 = vmax.f32 %v3722, 0.0
  %v4550 = vmax.f32 %v3725, 0.0
  %v4551 = vmax.f32 %v3728, 0.0
  %v4552 = vmax.f32 %v3731, 0.0
  %v4553 = vmax.f32 %v3734, 0.0
  %v4554 = vmax.f32 %v3737, 0.0
  %v4555 = vmax.f32 %v3740, 0.0
  %v4556 = vmax.f32 %v3743, 0.0
  %v4557 = vmax.f32 %v3746, 0.0
  %v4558 = vmax.f32 %v3749, 0.0
  %v4559 = vmax.f32 %v3752, 0.0
  %v4560 = vmax.f32 %v3755, 0.0
  %v4561 = vmax.f32 %v3758, 0.0
  %v4562 = vmax.f32 %v3761, 0.0
  %v4563 = vmax.f32 %v3764, 0.0
  %v4564 = vmax.f32 %v3767, 0.0
  %v4565 = vmax.f32 %v3770, 0.0
  %v4566 = vmax.f32 %v3773, 0.0
  %v4567 = vmax.f32 %v3776, 0.0
  %v4568 = vmax.f32 %v3779, 0.0
  %v4569 = vmax.f32 %v3782, 0.0
  %v4570 = vmax.f32 %v3785, 0.0
  %v4571 = vmax.f32 %v3788, 0.0
  %v4572 = vmax.f32 %v3791, 0.0
  %v4573 = vmax.f32 %v3794, 0.0
  %v4574 = vmax.f32 %v3797, 0.0
  %v4575 = vmax.f32 %v3800, 0.0
  %v4576 = vmax.f32 %v3803, 0.0
  %v4577 = vmax.f32 %v3806, 0.0
  %v4578 = vmax.f32 %v3809, 0.0
  %v4579 = vmax.f32 %v3812, 0.0
  %v4580 = vmax.f32 %v3815, 0.0
  %v4581 = vmax.f32 %v3818, 0.0
  %v4582 = vmax.f32 %v3821, 0.0
  %v4583 = vmax.f32 %v3824, 0.0
  %v4584 = vmax.f32 %v3827, 0.0
  %v4585 = vmax.f32 %v3830, 0.0
  %v4586 = vmax.f32 %v3833, 0.0
  %v4587 = vmax.f32 %v3836, 0.0
  %v4588 = vmax.f32 %v3839, 0.0
  %v4589 = vmax.f32 %v3842, 0.0
  %v4590 = vmax.f32 %v3845, 0.0
  %v4591 = vmax.f32 %v3848, 0.0
  %v4592 = vmax.f32 %v3851, 0.0
  %v4593 = vmax.f32 %v3854, 0.0
  %v4594 = vmax.f32 %v3857, 0.0
  %v4595 = vmax.f32 %v3860, 0.0
  %v4596 = vmax.f32 %v3863, 0.0
  %v4597 = vmax.f32 %v3866, 0.0
  %v4598 = vmax.f32 %v3869, 0.0
  %v4599 = vmax.f32 %v3872, 0.0
  %v4600 = vmax.f32 %v3875, 0.0
  %v4601 = vmax.f32 %v3878, 0.0
  %v4602 = vmax.f32 %v3881, 0.0
  %v4603 = vmax.f32 %v3884, 0.0
  %v4604 = vmax.f32 %v3887, 0.0
  %v4605 = vmax.f32 %v3890, 0.0
  %v4606 = vmax.f32 %v3893, 0.0
  %v4607 = vmax.f32 %v3896, 0.0
  %v4608 = vmax.f32 %v3899, 0.0
  %v4609 = vmax.f32 %v3902, 0.0
  %v4610 = vmax.f32 %v3905, 0.0
  %v4611 = vmax.f32 %v3908, 0.0
  %v4612 = vmax.f32 %v3911, 0.0
  %v4613 = vmax.f32 %v3914, 0.0
  %v4614 = vmax.f32 %v3917, 0.0
  %v4615 = vmax.f32 %v3920, 0.0
  %v4616 = vmax.f32 %v3923, 0.0
  %v4617 = vmax.f32 %v3926, 0.0
  %v4618 = vmax.f32 %v3929, 0.0
  %v4619 = vmax.f32 %v3932, 0.0
  %v4620 = vmax.f32 %v3935, 0.0
  %v4621 = vmax.f32 %v3938, 0.0
  %v4622 = vmax.f32 %v3941, 0.0
  %v4623 = vmax.f32 %v3944, 0.0
  %v4624 = vmax.f32 %v3947, 0.0
  %v4625 = vmax.f32 %v3950, 0.0
  %v4626 = vmax.f32 %v3953, 0.0
  %v4627 = vmax.f32 %v3956, 0.0
  %v4628 = vmax.f32 %v3959, 0.0
  %v4629 = vmax.f32 %v3962, 0.0
  %v4630 = vmax.f32 %v3965, 0.0
  %v4631 = vmax.f32 %v3968, 0.0
  %v4632 = vmax.f32 %v3971, 0.0
  %v4633 = vmax.f32 %v3974, 0.0
  %v4634 = vmax.f32 %v3977, 0.0
  %v4635 = vmax.f32 %v3980, 0.0
  %v4636 = vmax.f32 %v3983, 0.0
  %v4637 = vmax.f32 %v3986, 0.0
  %v4638 = vmax.f32 %v3989, 0.0
  %v4639 = vmax.f32 %v3992, 0.0
  %v4640 = vmax.f32 %v3995, 0.0
  %v4641 = vmax.f32 %v3998, 0.0
  %v4642 = vmax.f32 %v4001, 0.0
  %v4643 = vmax.f32 %v4004, 0.0
  %v4644 = vmax.f32 %v4007, 0.0
  %v4645 = vmax.f32 %v4010, 0.0
  %v4646 = vmax.f32 %v4013, 0.0
  %v4647 = vmax.f32 %v4016, 0.0
  %v4648 = vmax.f32 %v4019, 0.0
  %v4649 = vmax.f32 %v4022, 0.0
  %v4650 = vmax.f32 %v4025, 0.0
  %v4651 = vmax.f32 %v4028, 0.0
  %v4652 = vmax.f32 %v4031, 0.0
  %v4653 = vmax.f32 %v4034, 0.0
  %v4654 = vmax.f32 %v4037, 0.0
  %v4655 = vmax.f32 %v4040, 0.0
  %v4656 = vmax.f32 %v4043, 0.0
  %v4657 = vmax.f32 %v4046, 0.0
  %v4658 = vmax.f32 %v4049, 0.0
  %v4659 = vmax.f32 %v4052, 0.0
  %v4660 = vmax.f32 %v4055, 0.0
  %v4661 = vmax.f32 %v4058, 0.0
  %v4662 = vmax.f32 %v4061, 0.0
  %v4663 = vmax.f32 %v4064, 0.0
  %v4664 = vmax.f32 %v4067, 0.0
  %v4665 = vmax.f32 %v4070, 0.0
  %v4666 = vmax.f32 %v4073, 0.0
  %v4667 = vmax.f32 %v4076, 0.0
  %v4668 = vmax.f32 %v4079, 0.0
  %v4669 = vmax.f32 %v4082, 0.0
  %v4670 = vmax.f32 %v4085, 0.0
  %v4671 = vmax.f32 %v4088, 0.0
  %v4672 = vmax.f32 %v4091, 0.0
  %v4673 = vmax.f32 %v4094, 0.0
  %v4674 = vmax.f32 %v4097, 0.0
  %v4675 = vmax.f32 %v4099, %v4100
  %v4676 = vmax.f32 %v4101, %v4102
  %v4677 = vmax.f32 %v4103, %v4104
  %v4678 = vmax.f32 %v4105, %v4106
  %v4679 = vmax.f32 %v4107, %v4108
  %v4680 = vmax.f32 %v4109, %v4110
  %v4681 = vmax.f32 %v4111, %v4112
  %v4682 = vmax.f32 %v4113, %v4114
  %v4683 = vmax.f32 %v4115, %v4116
  %v4684 = vmax.f32 %v4117, %v4118
  %v4685 = vmax.f32 %v4119, %v4120
  %v4686 = vmax.f32 %v4121, %v4122
  %v4687 = vmax.f32 %v4147, %v4148
  %v4688 = vmax.f32 %v4149, %v4150
  %v4689 = vmax.f32 %v4151, %v4152
  %v4690 = vmax.f32 %v4153, %v4154
  %v4691 = vmax.f32 %v4155, %v4156
  %v4692 = vmax.f32 %v4157, %v4158
  %v4693 = vmax.f32 %v4159, %v4160
  %v4694 = vmax.f32 %v4161, %v4162
  %v4695 = vmax.f32 %v4163, %v4164
  %v4696 = vmax.f32 %v4165, %v4166
  %v4697 = vmax.f32 %v4167, %v4168
  %v4698 = vmax.f32 %v4169, %v4170
  %v4699 = vmax.f32 %v4195, %v4196
  %v4700 = vmax.f32 %v4197, %v4198
  %v4701 = vmax.f32 %v4199, %v4200
  %v4702 = vmax.f32 %v4201, %v4202
  %v4703 = vmax.f32 %v4203, %v4204
  %v4704 = vmax.f32 %v4205, %v4206
  %v4705 = vmax.f32 %v4207, %v4208
  %v4706 = vmax.f32 %v4209, %v4210
  %v4707 = vmax.f32 %v4211, %v4212
  %v4708 = vmax.f32 %v4213, %v4214
  %v4709 = vmax.f32 %v4215, %v4216
  %v4710 = vmax.f32 %v4217, %v4218
  %v4711 = vmax.f32 %v4243, %v4244
  %v4712 = vmax.f32 %v4245, %v4246
  %v4713 = vmax.f32 %v4247, %v4248
  %v4714 = vmax.f32 %v4249, %v4250
  %v4715 = vmax.f32 %v4251, %v4252
  %v4716 = vmax.f32 %v4253, %v4254
  %v4717 = vmax.f32 %v4255, %v4256
  %v4718 = vmax.f32 %v4257, %v4258
  %v4719 = vmax.f32 %v4259, %v4260
  %v4720 = vmax.f32 %v4261, %v4262
  %v4721 = vmax.f32 %v4263, %v4264
  %v4722 = vmax.f32 %v4265, %v4266
  %v4723 = vmax.f32 %v4291, %v4292
  %v4724 = vmax.f32 %v4293, %v4294
  %v4725 = vmax.f32 %v4295, %v4296
  %v4726 = vmax.f32 %v4297, %v4298
  %v4727 = vmax.f32 %v4299, %v4300
  %v4728 = vmax.f32 %v4301, %v4302
  %v4729 = vmax.f32 %v4303, %v4304
  %v4730 = vmax.f32 %v4305, %v4306
  %v4731 = vmax.f32 %v4307, %v4308
  %v4732 = vmax.f32 %v4309, %v4310
  %v4733 = vmax.f32 %v4311, %v4312
  %v4734 = vmax.f32 %v4313, %v4314
  %v4735 = vmax.f32 %v4339, %v4340
  %v4736 = vmax.f32 %v4341, %v4342
  %v4737 = vmax.f32 %v4343, %v4344
  %v4738 = vmax.f32 %v4345, %v4346
  %v4739 = vmax.f32 %v4347, %v4348
  %v4740 = vmax.f32 %v4349, %v4350
  %v4741 = vmax.f32 %v4351, %v4352
  %v4742 = vmax.f32 %v4353, %v4354
  %v4743 = vmax.f32 %v4355, %v4356
  %v4744 = vmax.f32 %v4357, %v4358
  %v4745 = vmax.f32 %v4359, %v4360
  %v4746 = vmax.f32 %v4361, %v4362
  %v4747 = vmax.f32 %v4387, %v4388
  %v4748 = vmax.f32 %v4389, %v4390
  %v4749 = vmax.f32 %v4391, %v4392
  %v4750 = vmax.f32 %v4393, %v4394
  %v4751 = vmax.f32 %v4395, %v4396
  %v4752 = vmax.f32 %v4397, %v4398
  %v4753 = vmax.f32 %v4399, %v4400
  %v4754 = vmax.f32 %v4401, %v4402
  %v4755 = vmax.f32 %v4403, %v4404
  %v4756 = vmax.f32 %v4405, %v4406
  %v4757 = vmax.f32 %v4407, %v4408
  %v4758 = vmax.f32 %v4409, %v4410
  %v4759 = vmax.f32 %v4435, %v4436
  %v4760 = vmax.f32 %v4437, %v4438
  %v4761 = vmax.f32 %v4439, %v4440
  %v4762 = vmax.f32 %v4441, %v4442
  %v4763 = vmax.f32 %v4443, %v4444
  %v4764 = vmax.f32 %v4445, %v4446
  %v4765 = vmax.f32 %v4447, %v4448
  %v4766 = vmax.f32 %v4449, %v4450
  %v4767 = vmax.f32 %v4451, %v4452
  %v4768 = vmax.f32 %v4453, %v4454
  %v4769 = vmax.f32 %v4455, %v4456
  %v4770 = vmax.f32 %v4457, %v4458
  %v4771 = vmax.f32 %v4483, %v4484
  %v4772 = vmax.f32 %v4485, %v4486
  %v4773 = vmax.f32 %v4487, %v4488
  %v4774 = vmax.f32 %v4489, %v4490
  %v4775 = vmax.f32 %v4491, %v4492
  %v4776 = vmax.f32 %v4493, %v4494
  %v4777 = vmax.f32 %v4495, %v4496
  %v4778 = vmax.f32 %v4497, %v4498
  %v4779 = vmax.f32 %v4499, %v4500
  %v4780 = vmax.f32 %v4501, %v4502
  %v4781 = vmax.f32 %v4503, %v4504
  %v4782 = vmax.f32 %v4505, %v4506
  %v4783 = vmax.f32 %v4531, %v4532
  %v4784 = vmax.f32 %v4533, %v4534
  %v4785 = vmax.f32 %v4535, %v4536
  %v4786 = vmax.f32 %v4537, %v4538
  %v4787 = vmax.f32 %v4539, %v4540
  %v4788 = vmax.f32 %v4541, %v4542
  %v4789 = vmax.f32 %v4543, %v4544
  %v4790 = vmax.f32 %v4545, %v4546
  %v4791 = vmax.f32 %v4547, %v4548
  %v4792 = vmax.f32 %v4549, %v4550
  %v4793 = vmax.f32 %v4551, %v4552
  %v4794 = vmax.f32 %v4553, %v4554
  %v4795 = vmax.f32 %v4579, %v4580
  %v4796 = vmax.f32 %v4581, %v4582
  %v4797 = vmax.f32 %v4583, %v4584
  %v4798 = vmax.f32 %v4585, %v4586
  %v4799 = vmax.f32 %v4587, %v4588
  %v4800 = vmax.f32 %v4589, %v4590
  %v4801 = vmax.f32 %v4591, %v4592
  %v4802 = vmax.f32 %v4593, %v4594
  %v4803 = vmax.f32 %v4595, %v4596
  %v4804 = vmax.f32 %v4597, %v4598
  %v4805 = vmax.f32 %v4599, %v4600
  %v4806 = vmax.f32 %v4601, %v4602
  %v4807 = vmax.f32 %v4627, %v4628
  %v4808 = vmax.f32 %v4629, %v4630
  %v4809 = vmax.f32 %v4631, %v4632
  %v4810 = vmax.f32 %v4633, %v4634
  %v4811 = vmax.f32 %v4635, %v4636
  %v4812 = vmax.f32 %v4637, %v4638
  %v4813 = vmax.f32 %v4639, %v4640
  %v4814 = vmax.f32 %v4641, %v4642
  %v4815 = vmax.f32 %v4643, %v4644
  %v4816 = vmax.f32 %v4645, %v4646
  %v4817 = vmax.f32 %v4647, %v4648
  %v4818 = vmax.f32 %v4649, %v4650
  %v4819 = vmax.f32 %v4123, %v4124
  %v4820 = vmax.f32 %v4125, %v4126
  %v4821 = vmax.f32 %v4127, %v4128
  %v4822 = vmax.f32 %v4129, %v4130
  %v4823 = vmax.f32 %v4131, %v4132
  %v4824 = vmax.f32 %v4133, %v4134
  %v4825 = vmax.f32 %v4135, %v4136
  %v4826 = vmax.f32 %v4137, %v4138
  %v4827 = vmax.f32 %v4139, %v4140
  %v4828 = vmax.f32 %v4141, %v4142
  %v4829 = vmax.f32 %v4143, %v4144
  %v4830 = vmax.f32 %v4145, %v4146
  %v4831 = vmax.f32 %v4171, %v4172
  %v4832 = vmax.f32 %v4173, %v4174
  %v4833 = vmax.f32 %v4175, %v4176
  %v4834 = vmax.f32 %v4177, %v4178
  %v4835 = vmax.f32 %v4179, %v4180
  %v4836 = vmax.f32 %v4181, %v4182
  %v4837 = vmax.f32 %v4183, %v4184
  %v4838 = vmax.f32 %v4185, %v4186
  %v4839 = vmax.f32 %v4187, %v4188
  %v4840 = vmax.f32 %v4189, %v4190
  %v4841 = vmax.f32 %v4191, %v4192
  %v4842 = vmax.f32 %v4193, %v4194
  %v4843 = vmax.f32 %v4219, %v4220
  %v4844 = vmax.f32 %v4221, %v4222
  %v4845 = vmax.f32 %v4223, %v4224
  %v4846 = vmax.f32 %v4225, %v4226
  %v4847 = vmax.f32 %v4227, %v4228
  %v4848 = vmax.f32 %v4229, %v4230
  %v4849 = vmax.f32 %v4231, %v4232
  %v4850 = vmax.f32 %v4233, %v4234
  %v4851 = vmax.f32 %v4235, %v4236
  %v4852 = vmax.f32 %v4237, %v4238
  %v4853 = vmax.f32 %v4239, %v4240
  %v4854 = vmax.f32 %v4241, %v4242
  %v4855 = vmax.f32 %v4267, %v4268
  %v4856 = vmax.f32 %v4269, %v4270
  %v4857 = vmax.f32 %v4271, %v4272
  %v4858 = vmax.f32 %v4273, %v4274
  %v4859 = vmax.f32 %v4275, %v4276
  %v4860 = vmax.f32 %v4277, %v4278
  %v4861 = vmax.f32 %v4279, %v4280
  %v4862 = vmax.f32 %v4281, %v4282
  %v4863 = vmax.f32 %v4283, %v4284
  %v4864 = vmax.f32 %v4285, %v4286
  %v4865 = vmax.f32 %v4287, %v4288
  %v4866 = vmax.f32 %v4289, %v4290
  %v4867 = vmax.f32 %v4315, %v4316
  %v4868 = vmax.f32 %v4317, %v4318
  %v4869 = vmax.f32 %v4319, %v4320
  %v4870 = vmax.f32 %v4321, %v4322
  %v4871 = vmax.f32 %v4323, %v4324
  %v4872 = vmax.f32 %v4325, %v4326
  %v4873 = vmax.f32 %v4327, %v4328
  %v4874 = vmax.f32 %v4329, %v4330
  %v4875 = vmax.f32 %v4331, %v4332
  %v4876 = vmax.f32 %v4333, %v4334
  %v4877 = vmax.f32 %v4335, %v4336
  %v4878 = vmax.f32 %v4337, %v4338
  %v4879 = vmax.f32 %v4363, %v4364
  %v4880 = vmax.f32 %v4365, %v4366
  %v4881 = vmax.f32 %v4367, %v4368
  %v4882 = vmax.f32 %v4369, %v4370
  %v4883 = vmax.f32 %v4371, %v4372
  %v4884 = vmax.f32 %v4373, %v4374
  %v4885 = vmax.f32 %v4375, %v4376
  %v4886 = vmax.f32 %v4377, %v4378
  %v4887 = vmax.f32 %v4379, %v4380
  %v4888 = vmax.f32 %v4381, %v4382
  %v4889 = vmax.f32 %v4383, %v4384
  %v4890 = vmax.f32 %v4385, %v4386
  %v4891 = vmax.f32 %v4411, %v4412
  %v4892 = vmax.f32 %v4413, %v4414
  %v4893 = vmax.f32 %v4415, %v4416
  %v4894 = vmax.f32 %v4417, %v4418
  %v4895 = vmax.f32 %v4419, %v4420
  %v4896 = vmax.f32 %v4421, %v4422
  %v4897 = vmax.f32 %v4423, %v4424
  %v4898 = vmax.f32 %v4425, %v4426
  %v4899 = vmax.f32 %v4427, %v4428
  %v4900 = vmax.f32 %v4429, %v4430
  %v4901 = vmax.f32 %v4431, %v4432
  %v4902 = vmax.f32 %v4433, %v4434
  %v4903 = vmax.f32 %v4459, %v4460
  %v4904 = vmax.f32 %v4461, %v4462
  %v4905 = vmax.f32 %v4463, %v4464
  %v4906 = vmax.f32 %v4465, %v4466
  %v4907 = vmax.f32 %v4467, %v4468
  %v4908 = vmax.f32 %v4469, %v4470
  %v4909 = vmax.f32 %v4471, %v4472
  %v4910 = vmax.f32 %v4473, %v4474
  %v4911 = vmax.f32 %v4475, %v4476
  %v4912 = vmax.f32 %v4477, %v4478
  %v4913 = vmax.f32 %v4479, %v4480
  %v4914 = vmax.f32 %v4481, %v4482
  %v4915 = vmax.f32 %v4507, %v4508
  %v4916 = vmax.f32 %v4509, %v4510
  %v4917 = vmax.f32 %v4511, %v4512
  %v4918 = vmax.f32 %v4513, %v4514
  %v4919 = vmax.f32 %v4515, %v4516
  %v4920 = vmax.f32 %v4517, %v4518
  %v4921 = vmax.f32 %v4519, %v4520
  %v4922 = vmax.f32 %v4521, %v4522
  %v4923 = vmax.f32 %v4523, %v4524
  %v4924 = vmax.f32 %v4525, %v4526
  %v4925 = vmax.f32 %v4527, %v4528
  %v4926 = vmax.f32 %v4529, %v4530
  %v4927 = vmax.f32 %v4555, %v4556
  %v4928 = vmax.f32 %v4557, %v4558
  %v4929 = vmax.f32 %v4559, %v4560
  %v4930 = vmax.f32 %v4561, %v4562
  %v4931 = vmax.f32 %v4563, %v4564
  %v4932 = vmax.f32 %v4565, %v4566
  %v4933 = vmax.f32 %v4567, %v4568
  %v4934 = vmax.f32 %v4569, %v4570
  %v4935 = vmax.f32 %v4571, %v4572
  %v4936 = vmax.f32 %v4573, %v4574
  %v4937 = vmax.f32 %v4575, %v4576
  %v4938 = vmax.f32 %v4577, %v4578
  %v4939 = vmax.f32 %v4603, %v4604
  %v4940 = vmax.f32 %v4605, %v4606
  %v4941 = vmax.f32 %v4607, %v4608
  %v4942 = vmax.f32 %v4609, %v4610
  %v4943 = vmax.f32 %v4611, %v4612
  %v4944 = vmax.f32 %v4613, %v4614
  %v4945 = vmax.f32 %v4615, %v4616
  %v4946 = vmax.f32 %v4617, %v4618
  %v4947 = vmax.f32 %v4619, %v4620
  %v4948 = vmax.f32 %v4621, %v4622
  %v4949 = vmax.f32 %v4623, %v4624
  %v4950 = vmax.f32 %v4625, %v4626
  %v4951 = vmax.f32 %v4651, %v4652
  %v4952 = vmax.f32 %v4653, %v4654
  %v4953 = vmax.f32 %v4655, %v4656
  %v4954 = vmax.f32 %v4657, %v4658
  %v4955 = vmax.f32 %v4659, %v4660
  %v4956 = vmax.f32 %v4661, %v4662
  %v4957 = vmax.f32 %v4663, %v4664
  %v4958 = vmax.f32 %v4665, %v4666
  %v4959 = vmax.f32 %v4667, %v4668
  %v4960 = vmax.f32 %v4669, %v4670
  %v4961 = vmax.f32 %v4671, %v4672
  %v4962 = vmax.f32 %v4673, %v4674
  %v4963 = vmax.f32 %v4675, %v4819
  %v4964 = vmax.f32 %v4676, %v4820
  %v4965 = vmax.f32 %v4677, %v4821
  %v4966 = vmax.f32 %v4678, %v4822
  %v4967 = vmax.f32 %v4679, %v4823
  %v4968 = vmax.f32 %v4680, %v4824
  %v4969 = vmax.f32 %v4681, %v4825
  %v4970 = vmax.f32 %v4682, %v4826
  %v4971 = vmax.f32 %v4683, %v4827
  %v4972 = vmax.f32 %v4684, %v4828
  %v4973 = vmax.f32 %v4685, %v4829
  %v4974 = vmax.f32 %v4686, %v4830
  %v4975 = vmax.f32 %v4687, %v4831
  %v4976 = vmax.f32 %v4688, %v4832
  %v4977 = vmax.f32 %v4689, %v4833
  %v4978 = vmax.f32 %v4690, %v4834
  %v4979 = vmax.f32 %v4691, %v4835
  %v4980 = vmax.f32 %v4692, %v4836
  %v4981 = vmax.f32 %v4693, %v4837
  %v4982 = vmax.f32 %v4694, %v4838
  %v4983 = vmax.f32 %v4695, %v4839
  %v4984 = vmax.f32 %v4696, %v4840
  %v4985 = vmax.f32 %v4697, %v4841
  %v4986 = vmax.f32 %v4698, %v4842
  %v4987 = vmax.f32 %v4699, %v4843
  %v4988 = vmax.f32 %v4700, %v4844
  %v4989 = vmax.f32 %v4701, %v4845
  %v4990 = vmax.f32 %v4702, %v4846
  %v4991 = vmax.f32 %v4703, %v4847
  %v4992 = vmax.f32 %v4704, %v4848
  %v4993 = vmax.f32 %v4705, %v4849
  %v4994 = vmax.f32 %v4706, %v4850
  %v4995 = vmax.f32 %v4707, %v4851
  %v4996 = vmax.f32 %v4708, %v4852
  %v4997 = vmax.f32 %v4709, %v4853
  %v4998 = vmax.f32 %v4710, %v4854
  %v4999 = vmax.f32 %v4711, %v4855
  %v5000 = vmax.f32 %v4712, %v4856
  %v5001 = vmax.f32 %v4713, %v4857
  %v5002 = vmax.f32 %v4714, %v4858
  %v5003 = vmax.f32 %v4715, %v4859
  %v5004 = vmax.f32 %v4716, %v4860
  %v5005 = vmax.f32 %v4717, %v4861
  %v5006 = vmax.f32 %v4718, %v4862
  %v5007 = vmax.f32 %v4719, %v4863
  %v5008 = vmax.f32 %v4720, %v4864
  %v5009 = vmax.f32 %v4721, %v4865
  %v5010 = vmax.f32 %v4722, %v4866
  %v5011 = vmax.f32 %v4723, %v4867
  %v5012 = vmax.f32 %v4724, %v4868
  %v5013 = vmax.f32 %v4725, %v4869
  %v5014 = vmax.f32 %v4726, %v4870
  %v5015 = vmax.f32 %v4727, %v4871
  %v5016 = vmax.f32 %v4728, %v4872
  %v5017 = vmax.f32 %v4729, %v4873
  %v5018 = vmax.f32 %v4730, %v4874
  %v5019 = vmax.f32 %v4731, %v4875
  %v5020 = vmax.f32 %v4732, %v4876
  %v5021 = vmax.f32 %v4733, %v4877
  %v5022 = vmax.f32 %v4734, %v4878
  %v5023 = vmax.f32 %v4735, %v4879
  %v5024 = vmax.f32 %v4736, %v4880
  %v5025 = vmax.f32 %v4737, %v4881
  %v5026 = vmax.f32 %v4738, %v4882
  %v5027 = vmax.f32 %v4739, %v4883
  %v5028 = vmax.f32 %v4740, %v4884
  %v5029 = vmax.f32 %v4741, %v4885
  %v5030 = vmax.f32 %v4742, %v4886
  %v5031 = vmax.f32 %v4743, %v4887
  %v5032 = vmax.f32 %v4744, %v4888
  %v5033 = vmax.f32 %v4745, %v4889
  %v5034 = vmax.f32 %v4746, %v4890
  %v5035 = vmax.f32 %v4747, %v4891
  %v5036 = vmax.f32 %v4748, %v4892
  %v5037 = vmax.f32 %v4749, %v4893
  %v5038 = vmax.f32 %v4750, %v4894
  %v5039 = vmax.f32 %v4751, %v4895
  %v5040 = vmax.f32 %v4752, %v4896
  %v5041 = vmax.f32 %v4753, %v4897
  %v5042 = vmax.f32 %v4754, %v4898
  %v5043 = vmax.f32 %v4755, %v4899
  %v5044 = vmax.f32 %v4756, %v4900
  %v5045 = vmax.f32 %v4757, %v4901
  %v5046 = vmax.f32 %v4758, %v4902
  %v5047 = vmax.f32 %v4759, %v4903
  %v5048 = vmax.f32 %v4760, %v4904
  %v5049 = vmax.f32 %v4761, %v4905
  %v5050 = vmax.f32 %v4762, %v4906
  %v5051 = vmax.f32 %v4763, %v4907
  %v5052 = vmax.f32 %v4764, %v4908
  %v5053 = vmax.f32 %v4765, %v4909
  %v5054 = vmax.f32 %v4766, %v4910
  %v5055 = vmax.f32 %v4767, %v4911
  %v5056 = vmax.f32 %v4768, %v4912
  %v5057 = vmax.f32 %v4769, %v4913
  %v5058 = vmax.f32 %v4770, %v4914
  %v5059 = vmax.f32 %v4771, %v4915
  %v5060 = vmax.f32 %v4772, %v4916
  %v5061 = vmax.f32 %v4773, %v4917
  %v5062 = vmax.f32 %v4774, %v4918
  %v5063 = vmax.f32 %v4775, %v4919
  %v5064 = vmax.f32 %v4776, %v4920
  %v5065 = vmax.f32 %v4777, %v4921
  %v5066 = vmax.f32 %v4778, %v4922
  %v5067 = vmax.f32 %v4779, %v4923
  %v5068 = vmax.f32 %v4780, %v4924
  %v5069 = vmax.f32 %v4781, %v4925
  %v5070 = vmax.f32 %v4782, %v4926
  %v5071 = vmax.f32 %v4783, %v4927
  %v5072 = vmax.f32 %v4784, %v4928
  %v5073 = vmax.f32 %v4785, %v4929
  %v5074 = vmax.f32 %v4786, %v4930
  %v5075 = vmax.f32 %v4787, %v4931
  %v5076 = vmax.f32 %v4788, %v4932
  %v5077 = vmax.f32 %v4789, %v4933
  %v5078 = vmax.f32 %v4790, %v4934
  %v5079 = vmax.f32 %v4791, %v4935
  %v5080 = vmax.f32 %v4792, %v4936
  %v5081 = vmax.f32 %v4793, %v4937
  %v5082 = vmax.f32 %v4794, %v4938
  %v5083 = vmax.f32 %v4795, %v4939
  %v5084 = vmax.f32 %v4796, %v4940
  %v5085 = vmax.f32 %v4797, %v4941
  %v5086 = vmax.f32 %v4798, %v4942
  %v5087 = vmax.f32 %v4799, %v4943
  %v5088 = vmax.f32 %v4800, %v4944
  %v5089 = vmax.f32 %v4801, %v4945
  %v5090 = vmax.f32 %v4802, %v4946
  %v5091 = vmax.f32 %v4803, %v4947
  %v5092 = vmax.f32 %v4804, %v4948
  %v5093 = vmax.f32 %v4805, %v4949
  %v5094 = vmax.f32 %v4806, %v4950
  %v5095 = vmax.f32 %v4807, %v4951
  %v5096 = vmax.f32 %v4808, %v4952
  %v5097 = vmax.f32 %v4809, %v4953
  %v5098 = vmax.f32 %v4810, %v4954
  %v5099 = vmax.f32 %v4811, %v4955
  %v5100 = vmax.f32 %v4812, %v4956
  %v5101 = vmax.f32 %v4813, %v4957
  %v5102 = vmax.f32 %v4814, %v4958
  %v5103 = vmax.f32 %v4815, %v4959
  %v5104 = vmax.f32 %v4816, %v4960
  %v5105 = vmax.f32 %v4817, %v4961
  %v5106 = vmax.f32 %v4818, %v4962
  %v5107 = vld [vmem:[%s4] sm:$0xff]
  %v5108 = vld [vmem:[%s4 + $0x8] sm:$0xff]
  %v5109 = vld [vmem:[%s4 + $0x10] sm:$0xff]
  %v5110 = vld [vmem:[%s4 + $0x18] sm:$0xff]
  %v5111 = vld [vmem:[%s4 + $0x20] sm:$0xff]
  %v5112 = vld [vmem:[%s4 + $0x28] sm:$0xff]
  %v5113 = vld [vmem:[%s4 + $0x30] sm:$0xff]
  %v5114 = vld [vmem:[%s4 + $0x38] sm:$0xff]
  %v5115 = vld [vmem:[%s4 + $0x40] sm:$0xff]
  %v5116 = vld [vmem:[%s4 + $0x48] sm:$0xff]
  %v5117 = vld [vmem:[%s4 + $0x50] sm:$0xff]
  %v5118 = vld [vmem:[%s4 + $0x58] sm:$0xff]
  %v5119 = vld [vmem:[%s4 + $0x60] sm:$0xff]
  %v5120 = vld [vmem:[%s4 + $0x68] sm:$0xff]
  %v5121 = vld [vmem:[%s4 + $0x70] sm:$0xff]
  %v5122 = vld [vmem:[%s4 + $0x78] sm:$0xff]
  %s5123 = scalar_lea.vmem %s4, 128
  %v5124 = vld [vmem:[%s5123] sm:$0xff]
  %v5125 = vld [vmem:[%s5123 + $0x8] sm:$0xff]
  %v5126 = vld [vmem:[%s5123 + $0x10] sm:$0xff]
  %v5127 = vld [vmem:[%s5123 + $0x18] sm:$0xff]
  %v5128 = vld [vmem:[%s5123 + $0x20] sm:$0xff]
  %v5129 = vld [vmem:[%s5123 + $0x28] sm:$0xff]
  %v5130 = vld [vmem:[%s5123 + $0x30] sm:$0xff]
  %v5131 = vld [vmem:[%s5123 + $0x38] sm:$0xff]
  %v5132 = vld [vmem:[%s5123 + $0x40] sm:$0xff]
  %v5133 = vld [vmem:[%s5123 + $0x48] sm:$0xff]
  %v5134 = vld [vmem:[%s5123 + $0x50] sm:$0xff]
  %v5135 = vld [vmem:[%s5123 + $0x58] sm:$0xff]
  %v5136 = vld [vmem:[%s5123 + $0x60] sm:$0xff]
  %v5137 = vld [vmem:[%s5123 + $0x68] sm:$0xff]
  %v5138 = vld [vmem:[%s5123 + $0x70] sm:$0xff]
  %v5139 = vld [vmem:[%s5123 + $0x78] sm:$0xff]
  %5140 = vmatpush.msra.mxu0 %v5139
  %5141 = vmatpush.msra.mxu0 %v5138
  %5142 = vmatpush.msra.mxu0 %v5137
  %5143 = vmatpush.msra.mxu0 %v5136
  %5144 = vmatpush.msra.mxu0 %v5135
  %5145 = vmatpush.msra.mxu0 %v5134
  %5146 = vmatpush.msra.mxu0 %v5133
  %5147 = vmatpush.msra.mxu0 %v5132
  %5148 = vmatpush.msra.mxu0 %v5131
  %5149 = vmatpush.msra.mxu0 %v5130
  %5150 = vmatpush.msra.mxu0 %v5129
  %5151 = vmatpush.msra.mxu0 %v5128
  %5152 = vmatpush.msra.mxu0 %v5127
  %5153 = vmatpush.msra.mxu0 %v5126
  %5154 = vmatpush.msra.mxu0 %v5125
  %5155 = vmatpush.msra.mxu0 %v5124
  %5156 = vmatmul.f32.gmra.mxu0 %v4964
  %v5157 = vpop.f32.mrf.mxu0
  %v5158 = vadd.f32 0.0, %v5157
  %5159 = vmatmul.f32.gmra.mxu0 %v4965
  %v5160 = vpop.f32.mrf.mxu0
  %v5161 = vadd.f32 0.0, %v5160
  %5162 = vmatmul.f32.gmra.mxu0 %v4966
  %v5163 = vpop.f32.mrf.mxu0
  %v5164 = vadd.f32 0.0, %v5163
  %5165 = vmatmul.f32.gmra.mxu0 %v4967
  %v5166 = vpop.f32.mrf.mxu0
  %v5167 = vadd.f32 0.0, %v5166
  %5168 = vmatmul.f32.gmra.mxu0 %v4968
  %v5169 = vpop.f32.mrf.mxu0
  %v5170 = vadd.f32 0.0, %v5169
  %5171 = vmatmul.f32.gmra.mxu0 %v4969
  %v5172 = vpop.f32.mrf.mxu0
  %v5173 = vadd.f32 0.0, %v5172
  %5174 = vmatmul.f32.gmra.mxu0 %v4970
  %v5175 = vpop.f32.mrf.mxu0
  %v5176 = vadd.f32 0.0, %v5175
  %5177 = vmatmul.f32.gmra.mxu0 %v4971
  %v5178 = vpop.f32.mrf.mxu0
  %v5179 = vadd.f32 0.0, %v5178
  %5180 = vmatmul.f32.gmra.mxu0 %v4976
  %v5181 = vpop.f32.mrf.mxu0
  %v5182 = vadd.f32 0.0, %v5181
  %5183 = vmatmul.f32.gmra.mxu0 %v4977
  %v5184 = vpop.f32.mrf.mxu0
  %v5185 = vadd.f32 0.0, %v5184
  %5186 = vmatmul.f32.gmra.mxu0 %v4978
  %v5187 = vpop.f32.mrf.mxu0
  %v5188 = vadd.f32 0.0, %v5187
  %5189 = vmatmul.f32.gmra.mxu0 %v4979
  %v5190 = vpop.f32.mrf.mxu0
  %v5191 = vadd.f32 0.0, %v5190
  %5192 = vmatmul.f32.gmra.mxu0 %v4980
  %v5193 = vpop.f32.mrf.mxu0
  %v5194 = vadd.f32 0.0, %v5193
  %5195 = vmatmul.f32.gmra.mxu0 %v4981
  %v5196 = vpop.f32.mrf.mxu0
  %v5197 = vadd.f32 0.0, %v5196
  %5198 = vmatmul.f32.gmra.mxu0 %v4982
  %v5199 = vpop.f32.mrf.mxu0
  %v5200 = vadd.f32 0.0, %v5199
  %5201 = vmatmul.f32.gmra.mxu0 %v4983
  %v5202 = vpop.f32.mrf.mxu0
  %v5203 = vadd.f32 0.0, %v5202
  %5204 = vmatmul.f32.gmra.mxu0 %v4988
  %v5205 = vpop.f32.mrf.mxu0
  %v5206 = vadd.f32 0.0, %v5205
  %5207 = vmatmul.f32.gmra.mxu0 %v4989
  %v5208 = vpop.f32.mrf.mxu0
  %v5209 = vadd.f32 0.0, %v5208
  %5210 = vmatmul.f32.gmra.mxu0 %v4990
  %v5211 = vpop.f32.mrf.mxu0
  %v5212 = vadd.f32 0.0, %v5211
  %5213 = vmatmul.f32.gmra.mxu0 %v4991
  %v5214 = vpop.f32.mrf.mxu0
  %v5215 = vadd.f32 0.0, %v5214
  %5216 = vmatmul.f32.gmra.mxu0 %v4992
  %v5217 = vpop.f32.mrf.mxu0
  %v5218 = vadd.f32 0.0, %v5217
  %5219 = vmatmul.f32.gmra.mxu0 %v4993
  %v5220 = vpop.f32.mrf.mxu0
  %v5221 = vadd.f32 0.0, %v5220
  %5222 = vmatmul.f32.gmra.mxu0 %v4994
  %v5223 = vpop.f32.mrf.mxu0
  %v5224 = vadd.f32 0.0, %v5223
  %5225 = vmatmul.f32.gmra.mxu0 %v4995
  %v5226 = vpop.f32.mrf.mxu0
  %v5227 = vadd.f32 0.0, %v5226
  %5228 = vmatmul.f32.gmra.mxu0 %v5000
  %v5229 = vpop.f32.mrf.mxu0
  %v5230 = vadd.f32 0.0, %v5229
  %5231 = vmatmul.f32.gmra.mxu0 %v5001
  %v5232 = vpop.f32.mrf.mxu0
  %v5233 = vadd.f32 0.0, %v5232
  %5234 = vmatmul.f32.gmra.mxu0 %v5002
  %v5235 = vpop.f32.mrf.mxu0
  %v5236 = vadd.f32 0.0, %v5235
  %5237 = vmatmul.f32.gmra.mxu0 %v5003
  %v5238 = vpop.f32.mrf.mxu0
  %v5239 = vadd.f32 0.0, %v5238
  %5240 = vmatmul.f32.gmra.mxu0 %v5004
  %v5241 = vpop.f32.mrf.mxu0
  %v5242 = vadd.f32 0.0, %v5241
  %5243 = vmatmul.f32.gmra.mxu0 %v5005
  %v5244 = vpop.f32.mrf.mxu0
  %v5245 = vadd.f32 0.0, %v5244
  %5246 = vmatmul.f32.gmra.mxu0 %v5006
  %v5247 = vpop.f32.mrf.mxu0
  %v5248 = vadd.f32 0.0, %v5247
  %5249 = vmatmul.f32.gmra.mxu0 %v5007
  %v5250 = vpop.f32.mrf.mxu0
  %v5251 = vadd.f32 0.0, %v5250
  %5252 = vmatmul.f32.gmra.mxu0 %v5012
  %v5253 = vpop.f32.mrf.mxu0
  %v5254 = vadd.f32 0.0, %v5253
  %5255 = vmatmul.f32.gmra.mxu0 %v5013
  %v5256 = vpop.f32.mrf.mxu0
  %v5257 = vadd.f32 0.0, %v5256
  %5258 = vmatmul.f32.gmra.mxu0 %v5014
  %v5259 = vpop.f32.mrf.mxu0
  %v5260 = vadd.f32 0.0, %v5259
  %5261 = vmatmul.f32.gmra.mxu0 %v5015
  %v5262 = vpop.f32.mrf.mxu0
  %v5263 = vadd.f32 0.0, %v5262
  %5264 = vmatmul.f32.gmra.mxu0 %v5016
  %v5265 = vpop.f32.mrf.mxu0
  %v5266 = vadd.f32 0.0, %v5265
  %5267 = vmatmul.f32.gmra.mxu0 %v5017
  %v5268 = vpop.f32.mrf.mxu0
  %v5269 = vadd.f32 0.0, %v5268
  %5270 = vmatmul.f32.gmra.mxu0 %v5018
  %v5271 = vpop.f32.mrf.mxu0
  %v5272 = vadd.f32 0.0, %v5271
  %5273 = vmatmul.f32.gmra.mxu0 %v5019
  %v5274 = vpop.f32.mrf.mxu0
  %v5275 = vadd.f32 0.0, %v5274
  %5276 = vmatmul.f32.gmra.mxu0 %v5024
  %v5277 = vpop.f32.mrf.mxu0
  %v5278 = vadd.f32 0.0, %v5277
  %5279 = vmatmul.f32.gmra.mxu0 %v5025
  %v5280 = vpop.f32.mrf.mxu0
  %v5281 = vadd.f32 0.0, %v5280
  %5282 = vmatmul.f32.gmra.mxu0 %v5026
  %v5283 = vpop.f32.mrf.mxu0
  %v5284 = vadd.f32 0.0, %v5283
  %5285 = vmatmul.f32.gmra.mxu0 %v5027
  %v5286 = vpop.f32.mrf.mxu0
  %v5287 = vadd.f32 0.0, %v5286
  %5288 = vmatmul.f32.gmra.mxu0 %v5028
  %v5289 = vpop.f32.mrf.mxu0
  %v5290 = vadd.f32 0.0, %v5289
  %5291 = vmatmul.f32.gmra.mxu0 %v5029
  %v5292 = vpop.f32.mrf.mxu0
  %v5293 = vadd.f32 0.0, %v5292
  %5294 = vmatmul.f32.gmra.mxu0 %v5030
  %v5295 = vpop.f32.mrf.mxu0
  %v5296 = vadd.f32 0.0, %v5295
  %5297 = vmatmul.f32.gmra.mxu0 %v5031
  %v5298 = vpop.f32.mrf.mxu0
  %v5299 = vadd.f32 0.0, %v5298
  %5300 = vmatmul.f32.gmra.mxu0 %v5036
  %v5301 = vpop.f32.mrf.mxu0
  %v5302 = vadd.f32 0.0, %v5301
  %5303 = vmatmul.f32.gmra.mxu0 %v5037
  %v5304 = vpop.f32.mrf.mxu0
  %v5305 = vadd.f32 0.0, %v5304
  %5306 = vmatmul.f32.gmra.mxu0 %v5038
  %v5307 = vpop.f32.mrf.mxu0
  %v5308 = vadd.f32 0.0, %v5307
  %5309 = vmatmul.f32.gmra.mxu0 %v5039
  %v5310 = vpop.f32.mrf.mxu0
  %v5311 = vadd.f32 0.0, %v5310
  %5312 = vmatmul.f32.gmra.mxu0 %v5040
  %v5313 = vpop.f32.mrf.mxu0
  %v5314 = vadd.f32 0.0, %v5313
  %5315 = vmatmul.f32.gmra.mxu0 %v5041
  %v5316 = vpop.f32.mrf.mxu0
  %v5317 = vadd.f32 0.0, %v5316
  %5318 = vmatmul.f32.gmra.mxu0 %v5042
  %v5319 = vpop.f32.mrf.mxu0
  %v5320 = vadd.f32 0.0, %v5319
  %5321 = vmatmul.f32.gmra.mxu0 %v5043
  %v5322 = vpop.f32.mrf.mxu0
  %v5323 = vadd.f32 0.0, %v5322
  %5324 = vmatmul.f32.gmra.mxu0 %v5048
  %v5325 = vpop.f32.mrf.mxu0
  %v5326 = vadd.f32 0.0, %v5325
  %5327 = vmatmul.f32.gmra.mxu0 %v5049
  %v5328 = vpop.f32.mrf.mxu0
  %v5329 = vadd.f32 0.0, %v5328
  %5330 = vmatmul.f32.gmra.mxu0 %v5050
  %v5331 = vpop.f32.mrf.mxu0
  %v5332 = vadd.f32 0.0, %v5331
  %5333 = vmatmul.f32.gmra.mxu0 %v5051
  %v5334 = vpop.f32.mrf.mxu0
  %v5335 = vadd.f32 0.0, %v5334
  %5336 = vmatmul.f32.gmra.mxu0 %v5052
  %v5337 = vpop.f32.mrf.mxu0
  %v5338 = vadd.f32 0.0, %v5337
  %5339 = vmatmul.f32.gmra.mxu0 %v5053
  %v5340 = vpop.f32.mrf.mxu0
  %v5341 = vadd.f32 0.0, %v5340
  %5342 = vmatmul.f32.gmra.mxu0 %v5054
  %v5343 = vpop.f32.mrf.mxu0
  %v5344 = vadd.f32 0.0, %v5343
  %5345 = vmatmul.f32.gmra.mxu0 %v5055
  %v5346 = vpop.f32.mrf.mxu0
  %v5347 = vadd.f32 0.0, %v5346
  %5348 = vdwg.mxu0
  %5349 = vmatpush.msra.mxu0 %v5122
  %5350 = vmatpush.msra.mxu0 %v5121
  %5351 = vmatpush.msra.mxu0 %v5120
  %5352 = vmatpush.msra.mxu0 %v5119
  %5353 = vmatpush.msra.mxu0 %v5118
  %5354 = vmatpush.msra.mxu0 %v5117
  %5355 = vmatpush.msra.mxu0 %v5116
  %5356 = vmatpush.msra.mxu0 %v5115
  %5357 = vmatpush.msra.mxu0 %v5114
  %5358 = vmatpush.msra.mxu0 %v5113
  %5359 = vmatpush.msra.mxu0 %v5112
  %5360 = vmatpush.msra.mxu0 %v5111
  %5361 = vmatpush.msra.mxu0 %v5110
  %5362 = vmatpush.msra.mxu0 %v5109
  %5363 = vmatpush.msra.mxu0 %v5108
  %5364 = vmatpush.msra.mxu0 %v5107
  %5365 = vmatmul.f32.gmra.mxu0 %v4963
  %v5366 = vpop.f32.mrf.mxu0
  %v5367 = vadd.f32 %v5158, %v5366
  %5368 = vmatmul.f32.gmra.mxu0 %v4964
  %v5369 = vpop.f32.mrf.mxu0
  %v5370 = vadd.f32 %v5161, %v5369
  %5371 = vmatmul.f32.gmra.mxu0 %v4965
  %v5372 = vpop.f32.mrf.mxu0
  %v5373 = vadd.f32 %v5164, %v5372
  %5374 = vmatmul.f32.gmra.mxu0 %v4966
  %v5375 = vpop.f32.mrf.mxu0
  %v5376 = vadd.f32 %v5167, %v5375
  %5377 = vmatmul.f32.gmra.mxu0 %v4967
  %v5378 = vpop.f32.mrf.mxu0
  %v5379 = vadd.f32 %v5170, %v5378
  %5380 = vmatmul.f32.gmra.mxu0 %v4968
  %v5381 = vpop.f32.mrf.mxu0
  %v5382 = vadd.f32 %v5173, %v5381
  %5383 = vmatmul.f32.gmra.mxu0 %v4969
  %v5384 = vpop.f32.mrf.mxu0
  %v5385 = vadd.f32 %v5176, %v5384
  %5386 = vmatmul.f32.gmra.mxu0 %v4970
  %v5387 = vpop.f32.mrf.mxu0
  %v5388 = vadd.f32 %v5179, %v5387
  %5389 = vmatmul.f32.gmra.mxu0 %v4975
  %v5390 = vpop.f32.mrf.mxu0
  %v5391 = vadd.f32 %v5182, %v5390
  %5392 = vmatmul.f32.gmra.mxu0 %v4976
  %v5393 = vpop.f32.mrf.mxu0
  %v5394 = vadd.f32 %v5185, %v5393
  %5395 = vmatmul.f32.gmra.mxu0 %v4977
  %v5396 = vpop.f32.mrf.mxu0
  %v5397 = vadd.f32 %v5188, %v5396
  %5398 = vmatmul.f32.gmra.mxu0 %v4978
  %v5399 = vpop.f32.mrf.mxu0
  %v5400 = vadd.f32 %v5191, %v5399
  %5401 = vmatmul.f32.gmra.mxu0 %v4979
  %v5402 = vpop.f32.mrf.mxu0
  %v5403 = vadd.f32 %v5194, %v5402
  %5404 = vmatmul.f32.gmra.mxu0 %v4980
  %v5405 = vpop.f32.mrf.mxu0
  %v5406 = vadd.f32 %v5197, %v5405
  %5407 = vmatmul.f32.gmra.mxu0 %v4981
  %v5408 = vpop.f32.mrf.mxu0
  %v5409 = vadd.f32 %v5200, %v5408
  %5410 = vmatmul.f32.gmra.mxu0 %v4982
  %v5411 = vpop.f32.mrf.mxu0
  %v5412 = vadd.f32 %v5203, %v5411
  %5413 = vmatmul.f32.gmra.mxu0 %v4987
  %v5414 = vpop.f32.mrf.mxu0
  %v5415 = vadd.f32 %v5206, %v5414
  %5416 = vmatmul.f32.gmra.mxu0 %v4988
  %v5417 = vpop.f32.mrf.mxu0
  %v5418 = vadd.f32 %v5209, %v5417
  %5419 = vmatmul.f32.gmra.mxu0 %v4989
  %v5420 = vpop.f32.mrf.mxu0
  %v5421 = vadd.f32 %v5212, %v5420
  %5422 = vmatmul.f32.gmra.mxu0 %v4990
  %v5423 = vpop.f32.mrf.mxu0
  %v5424 = vadd.f32 %v5215, %v5423
  %5425 = vmatmul.f32.gmra.mxu0 %v4991
  %v5426 = vpop.f32.mrf.mxu0
  %v5427 = vadd.f32 %v5218, %v5426
  %5428 = vmatmul.f32.gmra.mxu0 %v4992
  %v5429 = vpop.f32.mrf.mxu0
  %v5430 = vadd.f32 %v5221, %v5429
  %5431 = vmatmul.f32.gmra.mxu0 %v4993
  %v5432 = vpop.f32.mrf.mxu0
  %v5433 = vadd.f32 %v5224, %v5432
  %5434 = vmatmul.f32.gmra.mxu0 %v4994
  %v5435 = vpop.f32.mrf.mxu0
  %v5436 = vadd.f32 %v5227, %v5435
  %5437 = vmatmul.f32.gmra.mxu0 %v4999
  %v5438 = vpop.f32.mrf.mxu0
  %v5439 = vadd.f32 %v5230, %v5438
  %5440 = vmatmul.f32.gmra.mxu0 %v5000
  %v5441 = vpop.f32.mrf.mxu0
  %v5442 = vadd.f32 %v5233, %v5441
  %5443 = vmatmul.f32.gmra.mxu0 %v5001
  %v5444 = vpop.f32.mrf.mxu0
  %v5445 = vadd.f32 %v5236, %v5444
  %5446 = vmatmul.f32.gmra.mxu0 %v5002
  %v5447 = vpop.f32.mrf.mxu0
  %v5448 = vadd.f32 %v5239, %v5447
  %5449 = vmatmul.f32.gmra.mxu0 %v5003
  %v5450 = vpop.f32.mrf.mxu0
  %v5451 = vadd.f32 %v5242, %v5450
  %5452 = vmatmul.f32.gmra.mxu0 %v5004
  %v5453 = vpop.f32.mrf.mxu0
  %v5454 = vadd.f32 %v5245, %v5453
  %5455 = vmatmul.f32.gmra.mxu0 %v5005
  %v5456 = vpop.f32.mrf.mxu0
  %v5457 = vadd.f32 %v5248, %v5456
  %5458 = vmatmul.f32.gmra.mxu0 %v5006
  %v5459 = vpop.f32.mrf.mxu0
  %v5460 = vadd.f32 %v5251, %v5459
  %5461 = vmatmul.f32.gmra.mxu0 %v5011
  %v5462 = vpop.f32.mrf.mxu0
  %v5463 = vadd.f32 %v5254, %v5462
  %5464 = vmatmul.f32.gmra.mxu0 %v5012
  %v5465 = vpop.f32.mrf.mxu0
  %v5466 = vadd.f32 %v5257, %v5465
  %5467 = vmatmul.f32.gmra.mxu0 %v5013
  %v5468 = vpop.f32.mrf.mxu0
  %v5469 = vadd.f32 %v5260, %v5468
  %5470 = vmatmul.f32.gmra.mxu0 %v5014
  %v5471 = vpop.f32.mrf.mxu0
  %v5472 = vadd.f32 %v5263, %v5471
  %5473 = vmatmul.f32.gmra.mxu0 %v5015
  %v5474 = vpop.f32.mrf.mxu0
  %v5475 = vadd.f32 %v5266, %v5474
  %5476 = vmatmul.f32.gmra.mxu0 %v5016
  %v5477 = vpop.f32.mrf.mxu0
  %v5478 = vadd.f32 %v5269, %v5477
  %5479 = vmatmul.f32.gmra.mxu0 %v5017
  %v5480 = vpop.f32.mrf.mxu0
  %v5481 = vadd.f32 %v5272, %v5480
  %5482 = vmatmul.f32.gmra.mxu0 %v5018
  %v5483 = vpop.f32.mrf.mxu0
  %v5484 = vadd.f32 %v5275, %v5483
  %5485 = vmatmul.f32.gmra.mxu0 %v5023
  %v5486 = vpop.f32.mrf.mxu0
  %v5487 = vadd.f32 %v5278, %v5486
  %5488 = vmatmul.f32.gmra.mxu0 %v5024
  %v5489 = vpop.f32.mrf.mxu0
  %v5490 = vadd.f32 %v5281, %v5489
  %5491 = vmatmul.f32.gmra.mxu0 %v5025
  %v5492 = vpop.f32.mrf.mxu0
  %v5493 = vadd.f32 %v5284, %v5492
  %5494 = vmatmul.f32.gmra.mxu0 %v5026
  %v5495 = vpop.f32.mrf.mxu0
  %v5496 = vadd.f32 %v5287, %v5495
  %5497 = vmatmul.f32.gmra.mxu0 %v5027
  %v5498 = vpop.f32.mrf.mxu0
  %v5499 = vadd.f32 %v5290, %v5498
  %5500 = vmatmul.f32.gmra.mxu0 %v5028
  %v5501 = vpop.f32.mrf.mxu0
  %v5502 = vadd.f32 %v5293, %v5501
  %5503 = vmatmul.f32.gmra.mxu0 %v5029
  %v5504 = vpop.f32.mrf.mxu0
  %v5505 = vadd.f32 %v5296, %v5504
  %5506 = vmatmul.f32.gmra.mxu0 %v5030
  %v5507 = vpop.f32.mrf.mxu0
  %v5508 = vadd.f32 %v5299, %v5507
  %5509 = vmatmul.f32.gmra.mxu0 %v5035
  %v5510 = vpop.f32.mrf.mxu0
  %v5511 = vadd.f32 %v5302, %v5510
  %5512 = vmatmul.f32.gmra.mxu0 %v5036
  %v5513 = vpop.f32.mrf.mxu0
  %v5514 = vadd.f32 %v5305, %v5513
  %5515 = vmatmul.f32.gmra.mxu0 %v5037
  %v5516 = vpop.f32.mrf.mxu0
  %v5517 = vadd.f32 %v5308, %v5516
  %5518 = vmatmul.f32.gmra.mxu0 %v5038
  %v5519 = vpop.f32.mrf.mxu0
  %v5520 = vadd.f32 %v5311, %v5519
  %5521 = vmatmul.f32.gmra.mxu0 %v5039
  %v5522 = vpop.f32.mrf.mxu0
  %v5523 = vadd.f32 %v5314, %v5522
  %5524 = vmatmul.f32.gmra.mxu0 %v5040
  %v5525 = vpop.f32.mrf.mxu0
  %v5526 = vadd.f32 %v5317, %v5525
  %5527 = vmatmul.f32.gmra.mxu0 %v5041
  %v5528 = vpop.f32.mrf.mxu0
  %v5529 = vadd.f32 %v5320, %v5528
  %5530 = vmatmul.f32.gmra.mxu0 %v5042
  %v5531 = vpop.f32.mrf.mxu0
  %v5532 = vadd.f32 %v5323, %v5531
  %5533 = vmatmul.f32.gmra.mxu0 %v5047
  %v5534 = vpop.f32.mrf.mxu0
  %v5535 = vadd.f32 %v5326, %v5534
  %5536 = vmatmul.f32.gmra.mxu0 %v5048
  %v5537 = vpop.f32.mrf.mxu0
  %v5538 = vadd.f32 %v5329, %v5537
  %5539 = vmatmul.f32.gmra.mxu0 %v5049
  %v5540 = vpop.f32.mrf.mxu0
  %v5541 = vadd.f32 %v5332, %v5540
  %5542 = vmatmul.f32.gmra.mxu0 %v5050
  %v5543 = vpop.f32.mrf.mxu0
  %v5544 = vadd.f32 %v5335, %v5543
  %5545 = vmatmul.f32.gmra.mxu0 %v5051
  %v5546 = vpop.f32.mrf.mxu0
  %v5547 = vadd.f32 %v5338, %v5546
  %5548 = vmatmul.f32.gmra.mxu0 %v5052
  %v5549 = vpop.f32.mrf.mxu0
  %v5550 = vadd.f32 %v5341, %v5549
  %5551 = vmatmul.f32.gmra.mxu0 %v5053
  %v5552 = vpop.f32.mrf.mxu0
  %v5553 = vadd.f32 %v5344, %v5552
  %5554 = vmatmul.f32.gmra.mxu0 %v5054
  %v5555 = vpop.f32.mrf.mxu0
  %v5556 = vadd.f32 %v5347, %v5555
  %5557 = vdwg.mxu0
  %s5558 = scalar_lea.vmem %s4, 256
  %v5559 = vld [vmem:[%s5558] sm:$0xff]
  %v5560 = vld [vmem:[%s5558 + $0x8] sm:$0xff]
  %v5561 = vld [vmem:[%s5558 + $0x10] sm:$0xff]
  %v5562 = vld [vmem:[%s5558 + $0x18] sm:$0xff]
  %v5563 = vld [vmem:[%s5558 + $0x20] sm:$0xff]
  %v5564 = vld [vmem:[%s5558 + $0x28] sm:$0xff]
  %v5565 = vld [vmem:[%s5558 + $0x30] sm:$0xff]
  %v5566 = vld [vmem:[%s5558 + $0x38] sm:$0xff]
  %v5567 = vld [vmem:[%s5558 + $0x40] sm:$0xff]
  %v5568 = vld [vmem:[%s5558 + $0x48] sm:$0xff]
  %v5569 = vld [vmem:[%s5558 + $0x50] sm:$0xff]
  %v5570 = vld [vmem:[%s5558 + $0x58] sm:$0xff]
  %v5571 = vld [vmem:[%s5558 + $0x60] sm:$0xff]
  %v5572 = vld [vmem:[%s5558 + $0x68] sm:$0xff]
  %v5573 = vld [vmem:[%s5558 + $0x70] sm:$0xff]
  %v5574 = vld [vmem:[%s5558 + $0x78] sm:$0xff]
  %5575 = vmatpush.msra.mxu0 %v5574
  %5576 = vmatpush.msra.mxu0 %v5573
  %5577 = vmatpush.msra.mxu0 %v5572
  %5578 = vmatpush.msra.mxu0 %v5571
  %5579 = vmatpush.msra.mxu0 %v5570
  %5580 = vmatpush.msra.mxu0 %v5569
  %5581 = vmatpush.msra.mxu0 %v5568
  %5582 = vmatpush.msra.mxu0 %v5567
  %5583 = vmatpush.msra.mxu0 %v5566
  %5584 = vmatpush.msra.mxu0 %v5565
  %5585 = vmatpush.msra.mxu0 %v5564
  %5586 = vmatpush.msra.mxu0 %v5563
  %5587 = vmatpush.msra.mxu0 %v5562
  %5588 = vmatpush.msra.mxu0 %v5561
  %5589 = vmatpush.msra.mxu0 %v5560
  %5590 = vmatpush.msra.mxu0 %v5559
  %5591 = vmatmul.f32.gmra.mxu0 %v4965
  %v5592 = vpop.f32.mrf.mxu0
  %v5593 = vadd.f32 0.0, %v5592
  %5594 = vmatmul.f32.gmra.mxu0 %v4966
  %v5595 = vpop.f32.mrf.mxu0
  %v5596 = vadd.f32 0.0, %v5595
  %5597 = vmatmul.f32.gmra.mxu0 %v4967
  %v5598 = vpop.f32.mrf.mxu0
  %v5599 = vadd.f32 0.0, %v5598
  %5600 = vmatmul.f32.gmra.mxu0 %v4968
  %v5601 = vpop.f32.mrf.mxu0
  %v5602 = vadd.f32 0.0, %v5601
  %5603 = vmatmul.f32.gmra.mxu0 %v4969
  %v5604 = vpop.f32.mrf.mxu0
  %v5605 = vadd.f32 0.0, %v5604
  %5606 = vmatmul.f32.gmra.mxu0 %v4970
  %v5607 = vpop.f32.mrf.mxu0
  %v5608 = vadd.f32 0.0, %v5607
  %5609 = vmatmul.f32.gmra.mxu0 %v4971
  %v5610 = vpop.f32.mrf.mxu0
  %v5611 = vadd.f32 0.0, %v5610
  %5612 = vmatmul.f32.gmra.mxu0 %v4972
  %v5613 = vpop.f32.mrf.mxu0
  %v5614 = vadd.f32 0.0, %v5613
  %5615 = vmatmul.f32.gmra.mxu0 %v4977
  %v5616 = vpop.f32.mrf.mxu0
  %v5617 = vadd.f32 0.0, %v5616
  %5618 = vmatmul.f32.gmra.mxu0 %v4978
  %v5619 = vpop.f32.mrf.mxu0
  %v5620 = vadd.f32 0.0, %v5619
  %5621 = vmatmul.f32.gmra.mxu0 %v4979
  %v5622 = vpop.f32.mrf.mxu0
  %v5623 = vadd.f32 0.0, %v5622
  %5624 = vmatmul.f32.gmra.mxu0 %v4980
  %v5625 = vpop.f32.mrf.mxu0
  %v5626 = vadd.f32 0.0, %v5625
  %5627 = vmatmul.f32.gmra.mxu0 %v4981
  %v5628 = vpop.f32.mrf.mxu0
  %v5629 = vadd.f32 0.0, %v5628
  %5630 = vmatmul.f32.gmra.mxu0 %v4982
  %v5631 = vpop.f32.mrf.mxu0
  %v5632 = vadd.f32 0.0, %v5631
  %5633 = vmatmul.f32.gmra.mxu0 %v4983
  %v5634 = vpop.f32.mrf.mxu0
  %v5635 = vadd.f32 0.0, %v5634
  %5636 = vmatmul.f32.gmra.mxu0 %v4984
  %v5637 = vpop.f32.mrf.mxu0
  %v5638 = vadd.f32 0.0, %v5637
  %5639 = vmatmul.f32.gmra.mxu0 %v4989
  %v5640 = vpop.f32.mrf.mxu0
  %v5641 = vadd.f32 0.0, %v5640
  %5642 = vmatmul.f32.gmra.mxu0 %v4990
  %v5643 = vpop.f32.mrf.mxu0
  %v5644 = vadd.f32 0.0, %v5643
  %5645 = vmatmul.f32.gmra.mxu0 %v4991
  %v5646 = vpop.f32.mrf.mxu0
  %v5647 = vadd.f32 0.0, %v5646
  %5648 = vmatmul.f32.gmra.mxu0 %v4992
  %v5649 = vpop.f32.mrf.mxu0
  %v5650 = vadd.f32 0.0, %v5649
  %5651 = vmatmul.f32.gmra.mxu0 %v4993
  %v5652 = vpop.f32.mrf.mxu0
  %v5653 = vadd.f32 0.0, %v5652
  %5654 = vmatmul.f32.gmra.mxu0 %v4994
  %v5655 = vpop.f32.mrf.mxu0
  %v5656 = vadd.f32 0.0, %v5655
  %5657 = vmatmul.f32.gmra.mxu0 %v4995
  %v5658 = vpop.f32.mrf.mxu0
  %v5659 = vadd.f32 0.0, %v5658
  %5660 = vmatmul.f32.gmra.mxu0 %v4996
  %v5661 = vpop.f32.mrf.mxu0
  %v5662 = vadd.f32 0.0, %v5661
  %5663 = vmatmul.f32.gmra.mxu0 %v5001
  %v5664 = vpop.f32.mrf.mxu0
  %v5665 = vadd.f32 0.0, %v5664
  %5666 = vmatmul.f32.gmra.mxu0 %v5002
  %v5667 = vpop.f32.mrf.mxu0
  %v5668 = vadd.f32 0.0, %v5667
  %5669 = vmatmul.f32.gmra.mxu0 %v5003
  %v5670 = vpop.f32.mrf.mxu0
  %v5671 = vadd.f32 0.0, %v5670
  %5672 = vmatmul.f32.gmra.mxu0 %v5004
  %v5673 = vpop.f32.mrf.mxu0
  %v5674 = vadd.f32 0.0, %v5673
  %5675 = vmatmul.f32.gmra.mxu0 %v5005
  %v5676 = vpop.f32.mrf.mxu0
  %v5677 = vadd.f32 0.0, %v5676
  %5678 = vmatmul.f32.gmra.mxu0 %v5006
  %v5679 = vpop.f32.mrf.mxu0
  %v5680 = vadd.f32 0.0, %v5679
  %5681 = vmatmul.f32.gmra.mxu0 %v5007
  %v5682 = vpop.f32.mrf.mxu0
  %v5683 = vadd.f32 0.0, %v5682
  %5684 = vmatmul.f32.gmra.mxu0 %v5008
  %v5685 = vpop.f32.mrf.mxu0
  %v5686 = vadd.f32 0.0, %v5685
  %5687 = vmatmul.f32.gmra.mxu0 %v5013
  %v5688 = vpop.f32.mrf.mxu0
  %v5689 = vadd.f32 0.0, %v5688
  %5690 = vmatmul.f32.gmra.mxu0 %v5014
  %v5691 = vpop.f32.mrf.mxu0
  %v5692 = vadd.f32 0.0, %v5691
  %5693 = vmatmul.f32.gmra.mxu0 %v5015
  %v5694 = vpop.f32.mrf.mxu0
  %v5695 = vadd.f32 0.0, %v5694
  %5696 = vmatmul.f32.gmra.mxu0 %v5016
  %v5697 = vpop.f32.mrf.mxu0
  %v5698 = vadd.f32 0.0, %v5697
  %5699 = vmatmul.f32.gmra.mxu0 %v5017
  %v5700 = vpop.f32.mrf.mxu0
  %v5701 = vadd.f32 0.0, %v5700
  %5702 = vmatmul.f32.gmra.mxu0 %v5018
  %v5703 = vpop.f32.mrf.mxu0
  %v5704 = vadd.f32 0.0, %v5703
  %5705 = vmatmul.f32.gmra.mxu0 %v5019
  %v5706 = vpop.f32.mrf.mxu0
  %v5707 = vadd.f32 0.0, %v5706
  %5708 = vmatmul.f32.gmra.mxu0 %v5020
  %v5709 = vpop.f32.mrf.mxu0
  %v5710 = vadd.f32 0.0, %v5709
  %5711 = vmatmul.f32.gmra.mxu0 %v5025
  %v5712 = vpop.f32.mrf.mxu0
  %v5713 = vadd.f32 0.0, %v5712
  %5714 = vmatmul.f32.gmra.mxu0 %v5026
  %v5715 = vpop.f32.mrf.mxu0
  %v5716 = vadd.f32 0.0, %v5715
  %5717 = vmatmul.f32.gmra.mxu0 %v5027
  %v5718 = vpop.f32.mrf.mxu0
  %v5719 = vadd.f32 0.0, %v5718
  %5720 = vmatmul.f32.gmra.mxu0 %v5028
  %v5721 = vpop.f32.mrf.mxu0
  %v5722 = vadd.f32 0.0, %v5721
  %5723 = vmatmul.f32.gmra.mxu0 %v5029
  %v5724 = vpop.f32.mrf.mxu0
  %v5725 = vadd.f32 0.0, %v5724
  %5726 = vmatmul.f32.gmra.mxu0 %v5030
  %v5727 = vpop.f32.mrf.mxu0
  %v5728 = vadd.f32 0.0, %v5727
  %5729 = vmatmul.f32.gmra.mxu0 %v5031
  %v5730 = vpop.f32.mrf.mxu0
  %v5731 = vadd.f32 0.0, %v5730
  %5732 = vmatmul.f32.gmra.mxu0 %v5032
  %v5733 = vpop.f32.mrf.mxu0
  %v5734 = vadd.f32 0.0, %v5733
  %5735 = vmatmul.f32.gmra.mxu0 %v5037
  %v5736 = vpop.f32.mrf.mxu0
  %v5737 = vadd.f32 0.0, %v5736
  %5738 = vmatmul.f32.gmra.mxu0 %v5038
  %v5739 = vpop.f32.mrf.mxu0
  %v5740 = vadd.f32 0.0, %v5739
  %5741 = vmatmul.f32.gmra.mxu0 %v5039
  %v5742 = vpop.f32.mrf.mxu0
  %v5743 = vadd.f32 0.0, %v5742
  %5744 = vmatmul.f32.gmra.mxu0 %v5040
  %v5745 = vpop.f32.mrf.mxu0
  %v5746 = vadd.f32 0.0, %v5745
  %5747 = vmatmul.f32.gmra.mxu0 %v5041
  %v5748 = vpop.f32.mrf.mxu0
  %v5749 = vadd.f32 0.0, %v5748
  %5750 = vmatmul.f32.gmra.mxu0 %v5042
  %v5751 = vpop.f32.mrf.mxu0
  %v5752 = vadd.f32 0.0, %v5751
  %5753 = vmatmul.f32.gmra.mxu0 %v5043
  %v5754 = vpop.f32.mrf.mxu0
  %v5755 = vadd.f32 0.0, %v5754
  %5756 = vmatmul.f32.gmra.mxu0 %v5044
  %v5757 = vpop.f32.mrf.mxu0
  %v5758 = vadd.f32 0.0, %v5757
  %5759 = vmatmul.f32.gmra.mxu0 %v5049
  %v5760 = vpop.f32.mrf.mxu0
  %v5761 = vadd.f32 0.0, %v5760
  %5762 = vmatmul.f32.gmra.mxu0 %v5050
  %v5763 = vpop.f32.mrf.mxu0
  %v5764 = vadd.f32 0.0, %v5763
  %5765 = vmatmul.f32.gmra.mxu0 %v5051
  %v5766 = vpop.f32.mrf.mxu0
  %v5767 = vadd.f32 0.0, %v5766
  %5768 = vmatmul.f32.gmra.mxu0 %v5052
  %v5769 = vpop.f32.mrf.mxu0
  %v5770 = vadd.f32 0.0, %v5769
  %5771 = vmatmul.f32.gmra.mxu0 %v5053
  %v5772 = vpop.f32.mrf.mxu0
  %v5773 = vadd.f32 0.0, %v5772
  %5774 = vmatmul.f32.gmra.mxu0 %v5054
  %v5775 = vpop.f32.mrf.mxu0
  %v5776 = vadd.f32 0.0, %v5775
  %5777 = vmatmul.f32.gmra.mxu0 %v5055
  %v5778 = vpop.f32.mrf.mxu0
  %v5779 = vadd.f32 0.0, %v5778
  %5780 = vmatmul.f32.gmra.mxu0 %v5056
  %v5781 = vpop.f32.mrf.mxu0
  %v5782 = vadd.f32 0.0, %v5781
  %5783 = vdwg.mxu0
  %v5784 = vadd.f32 %v5367, %v5593
  %v5785 = vadd.f32 %v5370, %v5596
  %v5786 = vadd.f32 %v5373, %v5599
  %v5787 = vadd.f32 %v5376, %v5602
  %v5788 = vadd.f32 %v5379, %v5605
  %v5789 = vadd.f32 %v5382, %v5608
  %v5790 = vadd.f32 %v5385, %v5611
  %v5791 = vadd.f32 %v5388, %v5614
  %v5792 = vadd.f32 %v5391, %v5617
  %v5793 = vadd.f32 %v5394, %v5620
  %v5794 = vadd.f32 %v5397, %v5623
  %v5795 = vadd.f32 %v5400, %v5626
  %v5796 = vadd.f32 %v5403, %v5629
  %v5797 = vadd.f32 %v5406, %v5632
  %v5798 = vadd.f32 %v5409, %v5635
  %v5799 = vadd.f32 %v5412, %v5638
  %v5800 = vadd.f32 %v5415, %v5641
  %v5801 = vadd.f32 %v5418, %v5644
  %v5802 = vadd.f32 %v5421, %v5647
  %v5803 = vadd.f32 %v5424, %v5650
  %v5804 = vadd.f32 %v5427, %v5653
  %v5805 = vadd.f32 %v5430, %v5656
  %v5806 = vadd.f32 %v5433, %v5659
  %v5807 = vadd.f32 %v5436, %v5662
  %v5808 = vadd.f32 %v5439, %v5665
  %v5809 = vadd.f32 %v5442, %v5668
  %v5810 = vadd.f32 %v5445, %v5671
  %v5811 = vadd.f32 %v5448, %v5674
  %v5812 = vadd.f32 %v5451, %v5677
  %v5813 = vadd.f32 %v5454, %v5680
  %v5814 = vadd.f32 %v5457, %v5683
  %v5815 = vadd.f32 %v5460, %v5686
  %v5816 = vadd.f32 %v5463, %v5689
  %v5817 = vadd.f32 %v5466, %v5692
  %v5818 = vadd.f32 %v5469, %v5695
  %v5819 = vadd.f32 %v5472, %v5698
  %v5820 = vadd.f32 %v5475, %v5701
  %v5821 = vadd.f32 %v5478, %v5704
  %v5822 = vadd.f32 %v5481, %v5707
  %v5823 = vadd.f32 %v5484, %v5710
  %v5824 = vadd.f32 %v5487, %v5713
  %v5825 = vadd.f32 %v5490, %v5716
  %v5826 = vadd.f32 %v5493, %v5719
  %v5827 = vadd.f32 %v5496, %v5722
  %v5828 = vadd.f32 %v5499, %v5725
  %v5829 = vadd.f32 %v5502, %v5728
  %v5830 = vadd.f32 %v5505, %v5731
  %v5831 = vadd.f32 %v5508, %v5734
  %v5832 = vadd.f32 %v5511, %v5737
  %v5833 = vadd.f32 %v5514, %v5740
  %v5834 = vadd.f32 %v5517, %v5743
  %v5835 = vadd.f32 %v5520, %v5746
  %v5836 = vadd.f32 %v5523, %v5749
  %v5837 = vadd.f32 %v5526, %v5752
  %v5838 = vadd.f32 %v5529, %v5755
  %v5839 = vadd.f32 %v5532, %v5758
  %v5840 = vadd.f32 %v5535, %v5761
  %v5841 = vadd.f32 %v5538, %v5764
  %v5842 = vadd.f32 %v5541, %v5767
  %v5843 = vadd.f32 %v5544, %v5770
  %v5844 = vadd.f32 %v5547, %v5773
  %v5845 = vadd.f32 %v5550, %v5776
  %v5846 = vadd.f32 %v5553, %v5779
  %v5847 = vadd.f32 %v5556, %v5782
  %s5848 = scalar_lea.vmem %s4, 384
  %v5849 = vld [vmem:[%s5848] sm:$0xff]
  %v5850 = vld [vmem:[%s5848 + $0x8] sm:$0xff]
  %v5851 = vld [vmem:[%s5848 + $0x10] sm:$0xff]
  %v5852 = vld [vmem:[%s5848 + $0x18] sm:$0xff]
  %v5853 = vld [vmem:[%s5848 + $0x20] sm:$0xff]
  %v5854 = vld [vmem:[%s5848 + $0x28] sm:$0xff]
  %v5855 = vld [vmem:[%s5848 + $0x30] sm:$0xff]
  %v5856 = vld [vmem:[%s5848 + $0x38] sm:$0xff]
  %v5857 = vld [vmem:[%s5848 + $0x40] sm:$0xff]
  %v5858 = vld [vmem:[%s5848 + $0x48] sm:$0xff]
  %v5859 = vld [vmem:[%s5848 + $0x50] sm:$0xff]
  %v5860 = vld [vmem:[%s5848 + $0x58] sm:$0xff]
  %v5861 = vld [vmem:[%s5848 + $0x60] sm:$0xff]
  %v5862 = vld [vmem:[%s5848 + $0x68] sm:$0xff]
  %v5863 = vld [vmem:[%s5848 + $0x70] sm:$0xff]
  %v5864 = vld [vmem:[%s5848 + $0x78] sm:$0xff]
  %5865 = vmatpush.msra.mxu0 %v5864
  %5866 = vmatpush.msra.mxu0 %v5863
  %5867 = vmatpush.msra.mxu0 %v5862
  %5868 = vmatpush.msra.mxu0 %v5861
  %5869 = vmatpush.msra.mxu0 %v5860
  %5870 = vmatpush.msra.mxu0 %v5859
  %5871 = vmatpush.msra.mxu0 %v5858
  %5872 = vmatpush.msra.mxu0 %v5857
  %5873 = vmatpush.msra.mxu0 %v5856
  %5874 = vmatpush.msra.mxu0 %v5855
  %5875 = vmatpush.msra.mxu0 %v5854
  %5876 = vmatpush.msra.mxu0 %v5853
  %5877 = vmatpush.msra.mxu0 %v5852
  %5878 = vmatpush.msra.mxu0 %v5851
  %5879 = vmatpush.msra.mxu0 %v5850
  %5880 = vmatpush.msra.mxu0 %v5849
  %5881 = vmatmul.f32.gmra.mxu0 %v4966
  %v5882 = vpop.f32.mrf.mxu0
  %v5883 = vadd.f32 0.0, %v5882
  %5884 = vmatmul.f32.gmra.mxu0 %v4967
  %v5885 = vpop.f32.mrf.mxu0
  %v5886 = vadd.f32 0.0, %v5885
  %5887 = vmatmul.f32.gmra.mxu0 %v4968
  %v5888 = vpop.f32.mrf.mxu0
  %v5889 = vadd.f32 0.0, %v5888
  %5890 = vmatmul.f32.gmra.mxu0 %v4969
  %v5891 = vpop.f32.mrf.mxu0
  %v5892 = vadd.f32 0.0, %v5891
  %5893 = vmatmul.f32.gmra.mxu0 %v4970
  %v5894 = vpop.f32.mrf.mxu0
  %v5895 = vadd.f32 0.0, %v5894
  %5896 = vmatmul.f32.gmra.mxu0 %v4971
  %v5897 = vpop.f32.mrf.mxu0
  %v5898 = vadd.f32 0.0, %v5897
  %5899 = vmatmul.f32.gmra.mxu0 %v4972
  %v5900 = vpop.f32.mrf.mxu0
  %v5901 = vadd.f32 0.0, %v5900
  %5902 = vmatmul.f32.gmra.mxu0 %v4973
  %v5903 = vpop.f32.mrf.mxu0
  %v5904 = vadd.f32 0.0, %v5903
  %5905 = vmatmul.f32.gmra.mxu0 %v4978
  %v5906 = vpop.f32.mrf.mxu0
  %v5907 = vadd.f32 0.0, %v5906
  %5908 = vmatmul.f32.gmra.mxu0 %v4979
  %v5909 = vpop.f32.mrf.mxu0
  %v5910 = vadd.f32 0.0, %v5909
  %5911 = vmatmul.f32.gmra.mxu0 %v4980
  %v5912 = vpop.f32.mrf.mxu0
  %v5913 = vadd.f32 0.0, %v5912
  %5914 = vmatmul.f32.gmra.mxu0 %v4981
  %v5915 = vpop.f32.mrf.mxu0
  %v5916 = vadd.f32 0.0, %v5915
  %5917 = vmatmul.f32.gmra.mxu0 %v4982
  %v5918 = vpop.f32.mrf.mxu0
  %v5919 = vadd.f32 0.0, %v5918
  %5920 = vmatmul.f32.gmra.mxu0 %v4983
  %v5921 = vpop.f32.mrf.mxu0
  %v5922 = vadd.f32 0.0, %v5921
  %5923 = vmatmul.f32.gmra.mxu0 %v4984
  %v5924 = vpop.f32.mrf.mxu0
  %v5925 = vadd.f32 0.0, %v5924
  %5926 = vmatmul.f32.gmra.mxu0 %v4985
  %v5927 = vpop.f32.mrf.mxu0
  %v5928 = vadd.f32 0.0, %v5927
  %5929 = vmatmul.f32.gmra.mxu0 %v4990
  %v5930 = vpop.f32.mrf.mxu0
  %v5931 = vadd.f32 0.0, %v5930
  %5932 = vmatmul.f32.gmra.mxu0 %v4991
  %v5933 = vpop.f32.mrf.mxu0
  %v5934 = vadd.f32 0.0, %v5933
  %5935 = vmatmul.f32.gmra.mxu0 %v4992
  %v5936 = vpop.f32.mrf.mxu0
  %v5937 = vadd.f32 0.0, %v5936
  %5938 = vmatmul.f32.gmra.mxu0 %v4993
  %v5939 = vpop.f32.mrf.mxu0
  %v5940 = vadd.f32 0.0, %v5939
  %5941 = vmatmul.f32.gmra.mxu0 %v4994
  %v5942 = vpop.f32.mrf.mxu0
  %v5943 = vadd.f32 0.0, %v5942
  %5944 = vmatmul.f32.gmra.mxu0 %v4995
  %v5945 = vpop.f32.mrf.mxu0
  %v5946 = vadd.f32 0.0, %v5945
  %5947 = vmatmul.f32.gmra.mxu0 %v4996
  %v5948 = vpop.f32.mrf.mxu0
  %v5949 = vadd.f32 0.0, %v5948
  %5950 = vmatmul.f32.gmra.mxu0 %v4997
  %v5951 = vpop.f32.mrf.mxu0
  %v5952 = vadd.f32 0.0, %v5951
  %5953 = vmatmul.f32.gmra.mxu0 %v5002
  %v5954 = vpop.f32.mrf.mxu0
  %v5955 = vadd.f32 0.0, %v5954
  %5956 = vmatmul.f32.gmra.mxu0 %v5003
  %v5957 = vpop.f32.mrf.mxu0
  %v5958 = vadd.f32 0.0, %v5957
  %5959 = vmatmul.f32.gmra.mxu0 %v5004
  %v5960 = vpop.f32.mrf.mxu0
  %v5961 = vadd.f32 0.0, %v5960
  %5962 = vmatmul.f32.gmra.mxu0 %v5005
  %v5963 = vpop.f32.mrf.mxu0
  %v5964 = vadd.f32 0.0, %v5963
  %5965 = vmatmul.f32.gmra.mxu0 %v5006
  %v5966 = vpop.f32.mrf.mxu0
  %v5967 = vadd.f32 0.0, %v5966
  %5968 = vmatmul.f32.gmra.mxu0 %v5007
  %v5969 = vpop.f32.mrf.mxu0
  %v5970 = vadd.f32 0.0, %v5969
  %5971 = vmatmul.f32.gmra.mxu0 %v5008
  %v5972 = vpop.f32.mrf.mxu0
  %v5973 = vadd.f32 0.0, %v5972
  %5974 = vmatmul.f32.gmra.mxu0 %v5009
  %v5975 = vpop.f32.mrf.mxu0
  %v5976 = vadd.f32 0.0, %v5975
  %5977 = vmatmul.f32.gmra.mxu0 %v5014
  %v5978 = vpop.f32.mrf.mxu0
  %v5979 = vadd.f32 0.0, %v5978
  %5980 = vmatmul.f32.gmra.mxu0 %v5015
  %v5981 = vpop.f32.mrf.mxu0
  %v5982 = vadd.f32 0.0, %v5981
  %5983 = vmatmul.f32.gmra.mxu0 %v5016
  %v5984 = vpop.f32.mrf.mxu0
  %v5985 = vadd.f32 0.0, %v5984
  %5986 = vmatmul.f32.gmra.mxu0 %v5017
  %v5987 = vpop.f32.mrf.mxu0
  %v5988 = vadd.f32 0.0, %v5987
  %5989 = vmatmul.f32.gmra.mxu0 %v5018
  %v5990 = vpop.f32.mrf.mxu0
  %v5991 = vadd.f32 0.0, %v5990
  %5992 = vmatmul.f32.gmra.mxu0 %v5019
  %v5993 = vpop.f32.mrf.mxu0
  %v5994 = vadd.f32 0.0, %v5993
  %5995 = vmatmul.f32.gmra.mxu0 %v5020
  %v5996 = vpop.f32.mrf.mxu0
  %v5997 = vadd.f32 0.0, %v5996
  %5998 = vmatmul.f32.gmra.mxu0 %v5021
  %v5999 = vpop.f32.mrf.mxu0
  %v6000 = vadd.f32 0.0, %v5999
  %6001 = vmatmul.f32.gmra.mxu0 %v5026
  %v6002 = vpop.f32.mrf.mxu0
  %v6003 = vadd.f32 0.0, %v6002
  %6004 = vmatmul.f32.gmra.mxu0 %v5027
  %v6005 = vpop.f32.mrf.mxu0
  %v6006 = vadd.f32 0.0, %v6005
  %6007 = vmatmul.f32.gmra.mxu0 %v5028
  %v6008 = vpop.f32.mrf.mxu0
  %v6009 = vadd.f32 0.0, %v6008
  %6010 = vmatmul.f32.gmra.mxu0 %v5029
  %v6011 = vpop.f32.mrf.mxu0
  %v6012 = vadd.f32 0.0, %v6011
  %6013 = vmatmul.f32.gmra.mxu0 %v5030
  %v6014 = vpop.f32.mrf.mxu0
  %v6015 = vadd.f32 0.0, %v6014
  %6016 = vmatmul.f32.gmra.mxu0 %v5031
  %v6017 = vpop.f32.mrf.mxu0
  %v6018 = vadd.f32 0.0, %v6017
  %6019 = vmatmul.f32.gmra.mxu0 %v5032
  %v6020 = vpop.f32.mrf.mxu0
  %v6021 = vadd.f32 0.0, %v6020
  %6022 = vmatmul.f32.gmra.mxu0 %v5033
  %v6023 = vpop.f32.mrf.mxu0
  %v6024 = vadd.f32 0.0, %v6023
  %6025 = vmatmul.f32.gmra.mxu0 %v5038
  %v6026 = vpop.f32.mrf.mxu0
  %v6027 = vadd.f32 0.0, %v6026
  %6028 = vmatmul.f32.gmra.mxu0 %v5039
  %v6029 = vpop.f32.mrf.mxu0
  %v6030 = vadd.f32 0.0, %v6029
  %6031 = vmatmul.f32.gmra.mxu0 %v5040
  %v6032 = vpop.f32.mrf.mxu0
  %v6033 = vadd.f32 0.0, %v6032
  %6034 = vmatmul.f32.gmra.mxu0 %v5041
  %v6035 = vpop.f32.mrf.mxu0
  %v6036 = vadd.f32 0.0, %v6035
  %6037 = vmatmul.f32.gmra.mxu0 %v5042
  %v6038 = vpop.f32.mrf.mxu0
  %v6039 = vadd.f32 0.0, %v6038
  %6040 = vmatmul.f32.gmra.mxu0 %v5043
  %v6041 = vpop.f32.mrf.mxu0
  %v6042 = vadd.f32 0.0, %v6041
  %6043 = vmatmul.f32.gmra.mxu0 %v5044
  %v6044 = vpop.f32.mrf.mxu0
  %v6045 = vadd.f32 0.0, %v6044
  %6046 = vmatmul.f32.gmra.mxu0 %v5045
  %v6047 = vpop.f32.mrf.mxu0
  %v6048 = vadd.f32 0.0, %v6047
  %6049 = vmatmul.f32.gmra.mxu0 %v5050
  %v6050 = vpop.f32.mrf.mxu0
  %v6051 = vadd.f32 0.0, %v6050
  %6052 = vmatmul.f32.gmra.mxu0 %v5051
  %v6053 = vpop.f32.mrf.mxu0
  %v6054 = vadd.f32 0.0, %v6053
  %6055 = vmatmul.f32.gmra.mxu0 %v5052
  %v6056 = vpop.f32.mrf.mxu0
  %v6057 = vadd.f32 0.0, %v6056
  %6058 = vmatmul.f32.gmra.mxu0 %v5053
  %v6059 = vpop.f32.mrf.mxu0
  %v6060 = vadd.f32 0.0, %v6059
  %6061 = vmatmul.f32.gmra.mxu0 %v5054
  %v6062 = vpop.f32.mrf.mxu0
  %v6063 = vadd.f32 0.0, %v6062
  %6064 = vmatmul.f32.gmra.mxu0 %v5055
  %v6065 = vpop.f32.mrf.mxu0
  %v6066 = vadd.f32 0.0, %v6065
  %6067 = vmatmul.f32.gmra.mxu0 %v5056
  %v6068 = vpop.f32.mrf.mxu0
  %v6069 = vadd.f32 0.0, %v6068
  %6070 = vmatmul.f32.gmra.mxu0 %v5057
  %v6071 = vpop.f32.mrf.mxu0
  %v6072 = vadd.f32 0.0, %v6071
  %6073 = vdwg.mxu0
  %v6074 = vadd.f32 %v5784, %v5883
  %v6075 = vadd.f32 %v5785, %v5886
  %v6076 = vadd.f32 %v5786, %v5889
  %v6077 = vadd.f32 %v5787, %v5892
  %v6078 = vadd.f32 %v5788, %v5895
  %v6079 = vadd.f32 %v5789, %v5898
  %v6080 = vadd.f32 %v5790, %v5901
  %v6081 = vadd.f32 %v5791, %v5904
  %v6082 = vadd.f32 %v5792, %v5907
  %v6083 = vadd.f32 %v5793, %v5910
  %v6084 = vadd.f32 %v5794, %v5913
  %v6085 = vadd.f32 %v5795, %v5916
  %v6086 = vadd.f32 %v5796, %v5919
  %v6087 = vadd.f32 %v5797, %v5922
  %v6088 = vadd.f32 %v5798, %v5925
  %v6089 = vadd.f32 %v5799, %v5928
  %v6090 = vadd.f32 %v5800, %v5931
  %v6091 = vadd.f32 %v5801, %v5934
  %v6092 = vadd.f32 %v5802, %v5937
  %v6093 = vadd.f32 %v5803, %v5940
  %v6094 = vadd.f32 %v5804, %v5943
  %v6095 = vadd.f32 %v5805, %v5946
  %v6096 = vadd.f32 %v5806, %v5949
  %v6097 = vadd.f32 %v5807, %v5952
  %v6098 = vadd.f32 %v5808, %v5955
  %v6099 = vadd.f32 %v5809, %v5958
  %v6100 = vadd.f32 %v5810, %v5961
  %v6101 = vadd.f32 %v5811, %v5964
  %v6102 = vadd.f32 %v5812, %v5967
  %v6103 = vadd.f32 %v5813, %v5970
  %v6104 = vadd.f32 %v5814, %v5973
  %v6105 = vadd.f32 %v5815, %v5976
  %v6106 = vadd.f32 %v5816, %v5979
  %v6107 = vadd.f32 %v5817, %v5982
  %v6108 = vadd.f32 %v5818, %v5985
  %v6109 = vadd.f32 %v5819, %v5988
  %v6110 = vadd.f32 %v5820, %v5991
  %v6111 = vadd.f32 %v5821, %v5994
  %v6112 = vadd.f32 %v5822, %v5997
  %v6113 = vadd.f32 %v5823, %v6000
  %v6114 = vadd.f32 %v5824, %v6003
  %v6115 = vadd.f32 %v5825, %v6006
  %v6116 = vadd.f32 %v5826, %v6009
  %v6117 = vadd.f32 %v5827, %v6012
  %v6118 = vadd.f32 %v5828, %v6015
  %v6119 = vadd.f32 %v5829, %v6018
  %v6120 = vadd.f32 %v5830, %v6021
  %v6121 = vadd.f32 %v5831, %v6024
  %v6122 = vadd.f32 %v5832, %v6027
  %v6123 = vadd.f32 %v5833, %v6030
  %v6124 = vadd.f32 %v5834, %v6033
  %v6125 = vadd.f32 %v5835, %v6036
  %v6126 = vadd.f32 %v5836, %v6039
  %v6127 = vadd.f32 %v5837, %v6042
  %v6128 = vadd.f32 %v5838, %v6045
  %v6129 = vadd.f32 %v5839, %v6048
  %v6130 = vadd.f32 %v5840, %v6051
  %v6131 = vadd.f32 %v5841, %v6054
  %v6132 = vadd.f32 %v5842, %v6057
  %v6133 = vadd.f32 %v5843, %v6060
  %v6134 = vadd.f32 %v5844, %v6063
  %v6135 = vadd.f32 %v5845, %v6066
  %v6136 = vadd.f32 %v5846, %v6069
  %v6137 = vadd.f32 %v5847, %v6072
  %s6138 = scalar_lea.vmem %s4, 512
  %v6139 = vld [vmem:[%s6138] sm:$0xff]
  %v6140 = vld [vmem:[%s6138 + $0x8] sm:$0xff]
  %v6141 = vld [vmem:[%s6138 + $0x10] sm:$0xff]
  %v6142 = vld [vmem:[%s6138 + $0x18] sm:$0xff]
  %v6143 = vld [vmem:[%s6138 + $0x20] sm:$0xff]
  %v6144 = vld [vmem:[%s6138 + $0x28] sm:$0xff]
  %v6145 = vld [vmem:[%s6138 + $0x30] sm:$0xff]
  %v6146 = vld [vmem:[%s6138 + $0x38] sm:$0xff]
  %v6147 = vld [vmem:[%s6138 + $0x40] sm:$0xff]
  %v6148 = vld [vmem:[%s6138 + $0x48] sm:$0xff]
  %v6149 = vld [vmem:[%s6138 + $0x50] sm:$0xff]
  %v6150 = vld [vmem:[%s6138 + $0x58] sm:$0xff]
  %v6151 = vld [vmem:[%s6138 + $0x60] sm:$0xff]
  %v6152 = vld [vmem:[%s6138 + $0x68] sm:$0xff]
  %v6153 = vld [vmem:[%s6138 + $0x70] sm:$0xff]
  %v6154 = vld [vmem:[%s6138 + $0x78] sm:$0xff]
  %6155 = vmatpush.msra.mxu0 %v6154
  %6156 = vmatpush.msra.mxu0 %v6153
  %6157 = vmatpush.msra.mxu0 %v6152
  %6158 = vmatpush.msra.mxu0 %v6151
  %6159 = vmatpush.msra.mxu0 %v6150
  %6160 = vmatpush.msra.mxu0 %v6149
  %6161 = vmatpush.msra.mxu0 %v6148
  %6162 = vmatpush.msra.mxu0 %v6147
  %6163 = vmatpush.msra.mxu0 %v6146
  %6164 = vmatpush.msra.mxu0 %v6145
  %6165 = vmatpush.msra.mxu0 %v6144
  %6166 = vmatpush.msra.mxu0 %v6143
  %6167 = vmatpush.msra.mxu0 %v6142
  %6168 = vmatpush.msra.mxu0 %v6141
  %6169 = vmatpush.msra.mxu0 %v6140
  %6170 = vmatpush.msra.mxu0 %v6139
  %6171 = vmatmul.f32.gmra.mxu0 %v4967
  %v6172 = vpop.f32.mrf.mxu0
  %v6173 = vadd.f32 0.0, %v6172
  %6174 = vmatmul.f32.gmra.mxu0 %v4968
  %v6175 = vpop.f32.mrf.mxu0
  %v6176 = vadd.f32 0.0, %v6175
  %6177 = vmatmul.f32.gmra.mxu0 %v4969
  %v6178 = vpop.f32.mrf.mxu0
  %v6179 = vadd.f32 0.0, %v6178
  %6180 = vmatmul.f32.gmra.mxu0 %v4970
  %v6181 = vpop.f32.mrf.mxu0
  %v6182 = vadd.f32 0.0, %v6181
  %6183 = vmatmul.f32.gmra.mxu0 %v4971
  %v6184 = vpop.f32.mrf.mxu0
  %v6185 = vadd.f32 0.0, %v6184
  %6186 = vmatmul.f32.gmra.mxu0 %v4972
  %v6187 = vpop.f32.mrf.mxu0
  %v6188 = vadd.f32 0.0, %v6187
  %6189 = vmatmul.f32.gmra.mxu0 %v4973
  %v6190 = vpop.f32.mrf.mxu0
  %v6191 = vadd.f32 0.0, %v6190
  %6192 = vmatmul.f32.gmra.mxu0 %v4974
  %v6193 = vpop.f32.mrf.mxu0
  %v6194 = vadd.f32 0.0, %v6193
  %6195 = vmatmul.f32.gmra.mxu0 %v4979
  %v6196 = vpop.f32.mrf.mxu0
  %v6197 = vadd.f32 0.0, %v6196
  %6198 = vmatmul.f32.gmra.mxu0 %v4980
  %v6199 = vpop.f32.mrf.mxu0
  %v6200 = vadd.f32 0.0, %v6199
  %6201 = vmatmul.f32.gmra.mxu0 %v4981
  %v6202 = vpop.f32.mrf.mxu0
  %v6203 = vadd.f32 0.0, %v6202
  %6204 = vmatmul.f32.gmra.mxu0 %v4982
  %v6205 = vpop.f32.mrf.mxu0
  %v6206 = vadd.f32 0.0, %v6205
  %6207 = vmatmul.f32.gmra.mxu0 %v4983
  %v6208 = vpop.f32.mrf.mxu0
  %v6209 = vadd.f32 0.0, %v6208
  %6210 = vmatmul.f32.gmra.mxu0 %v4984
  %v6211 = vpop.f32.mrf.mxu0
  %v6212 = vadd.f32 0.0, %v6211
  %6213 = vmatmul.f32.gmra.mxu0 %v4985
  %v6214 = vpop.f32.mrf.mxu0
  %v6215 = vadd.f32 0.0, %v6214
  %6216 = vmatmul.f32.gmra.mxu0 %v4986
  %v6217 = vpop.f32.mrf.mxu0
  %v6218 = vadd.f32 0.0, %v6217
  %6219 = vmatmul.f32.gmra.mxu0 %v4991
  %v6220 = vpop.f32.mrf.mxu0
  %v6221 = vadd.f32 0.0, %v6220
  %6222 = vmatmul.f32.gmra.mxu0 %v4992
  %v6223 = vpop.f32.mrf.mxu0
  %v6224 = vadd.f32 0.0, %v6223
  %6225 = vmatmul.f32.gmra.mxu0 %v4993
  %v6226 = vpop.f32.mrf.mxu0
  %v6227 = vadd.f32 0.0, %v6226
  %6228 = vmatmul.f32.gmra.mxu0 %v4994
  %v6229 = vpop.f32.mrf.mxu0
  %v6230 = vadd.f32 0.0, %v6229
  %6231 = vmatmul.f32.gmra.mxu0 %v4995
  %v6232 = vpop.f32.mrf.mxu0
  %v6233 = vadd.f32 0.0, %v6232
  %6234 = vmatmul.f32.gmra.mxu0 %v4996
  %v6235 = vpop.f32.mrf.mxu0
  %v6236 = vadd.f32 0.0, %v6235
  %6237 = vmatmul.f32.gmra.mxu0 %v4997
  %v6238 = vpop.f32.mrf.mxu0
  %v6239 = vadd.f32 0.0, %v6238
  %6240 = vmatmul.f32.gmra.mxu0 %v4998
  %v6241 = vpop.f32.mrf.mxu0
  %v6242 = vadd.f32 0.0, %v6241
  %6243 = vmatmul.f32.gmra.mxu0 %v5003
  %v6244 = vpop.f32.mrf.mxu0
  %v6245 = vadd.f32 0.0, %v6244
  %6246 = vmatmul.f32.gmra.mxu0 %v5004
  %v6247 = vpop.f32.mrf.mxu0
  %v6248 = vadd.f32 0.0, %v6247
  %6249 = vmatmul.f32.gmra.mxu0 %v5005
  %v6250 = vpop.f32.mrf.mxu0
  %v6251 = vadd.f32 0.0, %v6250
  %6252 = vmatmul.f32.gmra.mxu0 %v5006
  %v6253 = vpop.f32.mrf.mxu0
  %v6254 = vadd.f32 0.0, %v6253
  %6255 = vmatmul.f32.gmra.mxu0 %v5007
  %v6256 = vpop.f32.mrf.mxu0
  %v6257 = vadd.f32 0.0, %v6256
  %6258 = vmatmul.f32.gmra.mxu0 %v5008
  %v6259 = vpop.f32.mrf.mxu0
  %v6260 = vadd.f32 0.0, %v6259
  %6261 = vmatmul.f32.gmra.mxu0 %v5009
  %v6262 = vpop.f32.mrf.mxu0
  %v6263 = vadd.f32 0.0, %v6262
  %6264 = vmatmul.f32.gmra.mxu0 %v5010
  %v6265 = vpop.f32.mrf.mxu0
  %v6266 = vadd.f32 0.0, %v6265
  %6267 = vmatmul.f32.gmra.mxu0 %v5015
  %v6268 = vpop.f32.mrf.mxu0
  %v6269 = vadd.f32 0.0, %v6268
  %6270 = vmatmul.f32.gmra.mxu0 %v5016
  %v6271 = vpop.f32.mrf.mxu0
  %v6272 = vadd.f32 0.0, %v6271
  %6273 = vmatmul.f32.gmra.mxu0 %v5017
  %v6274 = vpop.f32.mrf.mxu0
  %v6275 = vadd.f32 0.0, %v6274
  %6276 = vmatmul.f32.gmra.mxu0 %v5018
  %v6277 = vpop.f32.mrf.mxu0
  %v6278 = vadd.f32 0.0, %v6277
  %6279 = vmatmul.f32.gmra.mxu0 %v5019
  %v6280 = vpop.f32.mrf.mxu0
  %v6281 = vadd.f32 0.0, %v6280
  %6282 = vmatmul.f32.gmra.mxu0 %v5020
  %v6283 = vpop.f32.mrf.mxu0
  %v6284 = vadd.f32 0.0, %v6283
  %6285 = vmatmul.f32.gmra.mxu0 %v5021
  %v6286 = vpop.f32.mrf.mxu0
  %v6287 = vadd.f32 0.0, %v6286
  %6288 = vmatmul.f32.gmra.mxu0 %v5022
  %v6289 = vpop.f32.mrf.mxu0
  %v6290 = vadd.f32 0.0, %v6289
  %6291 = vmatmul.f32.gmra.mxu0 %v5027
  %v6292 = vpop.f32.mrf.mxu0
  %v6293 = vadd.f32 0.0, %v6292
  %6294 = vmatmul.f32.gmra.mxu0 %v5028
  %v6295 = vpop.f32.mrf.mxu0
  %v6296 = vadd.f32 0.0, %v6295
  %6297 = vmatmul.f32.gmra.mxu0 %v5029
  %v6298 = vpop.f32.mrf.mxu0
  %v6299 = vadd.f32 0.0, %v6298
  %6300 = vmatmul.f32.gmra.mxu0 %v5030
  %v6301 = vpop.f32.mrf.mxu0
  %v6302 = vadd.f32 0.0, %v6301
  %6303 = vmatmul.f32.gmra.mxu0 %v5031
  %v6304 = vpop.f32.mrf.mxu0
  %v6305 = vadd.f32 0.0, %v6304
  %6306 = vmatmul.f32.gmra.mxu0 %v5032
  %v6307 = vpop.f32.mrf.mxu0
  %v6308 = vadd.f32 0.0, %v6307
  %6309 = vmatmul.f32.gmra.mxu0 %v5033
  %v6310 = vpop.f32.mrf.mxu0
  %v6311 = vadd.f32 0.0, %v6310
  %6312 = vmatmul.f32.gmra.mxu0 %v5034
  %v6313 = vpop.f32.mrf.mxu0
  %v6314 = vadd.f32 0.0, %v6313
  %6315 = vmatmul.f32.gmra.mxu0 %v5039
  %v6316 = vpop.f32.mrf.mxu0
  %v6317 = vadd.f32 0.0, %v6316
  %6318 = vmatmul.f32.gmra.mxu0 %v5040
  %v6319 = vpop.f32.mrf.mxu0
  %v6320 = vadd.f32 0.0, %v6319
  %6321 = vmatmul.f32.gmra.mxu0 %v5041
  %v6322 = vpop.f32.mrf.mxu0
  %v6323 = vadd.f32 0.0, %v6322
  %6324 = vmatmul.f32.gmra.mxu0 %v5042
  %v6325 = vpop.f32.mrf.mxu0
  %v6326 = vadd.f32 0.0, %v6325
  %6327 = vmatmul.f32.gmra.mxu0 %v5043
  %v6328 = vpop.f32.mrf.mxu0
  %v6329 = vadd.f32 0.0, %v6328
  %6330 = vmatmul.f32.gmra.mxu0 %v5044
  %v6331 = vpop.f32.mrf.mxu0
  %v6332 = vadd.f32 0.0, %v6331
  %6333 = vmatmul.f32.gmra.mxu0 %v5045
  %v6334 = vpop.f32.mrf.mxu0
  %v6335 = vadd.f32 0.0, %v6334
  %6336 = vmatmul.f32.gmra.mxu0 %v5046
  %v6337 = vpop.f32.mrf.mxu0
  %v6338 = vadd.f32 0.0, %v6337
  %6339 = vmatmul.f32.gmra.mxu0 %v5051
  %v6340 = vpop.f32.mrf.mxu0
  %v6341 = vadd.f32 0.0, %v6340
  %6342 = vmatmul.f32.gmra.mxu0 %v5052
  %v6343 = vpop.f32.mrf.mxu0
  %v6344 = vadd.f32 0.0, %v6343
  %6345 = vmatmul.f32.gmra.mxu0 %v5053
  %v6346 = vpop.f32.mrf.mxu0
  %v6347 = vadd.f32 0.0, %v6346
  %6348 = vmatmul.f32.gmra.mxu0 %v5054
  %v6349 = vpop.f32.mrf.mxu0
  %v6350 = vadd.f32 0.0, %v6349
  %6351 = vmatmul.f32.gmra.mxu0 %v5055
  %v6352 = vpop.f32.mrf.mxu0
  %v6353 = vadd.f32 0.0, %v6352
  %6354 = vmatmul.f32.gmra.mxu0 %v5056
  %v6355 = vpop.f32.mrf.mxu0
  %v6356 = vadd.f32 0.0, %v6355
  %6357 = vmatmul.f32.gmra.mxu0 %v5057
  %v6358 = vpop.f32.mrf.mxu0
  %v6359 = vadd.f32 0.0, %v6358
  %6360 = vmatmul.f32.gmra.mxu0 %v5058
  %v6361 = vpop.f32.mrf.mxu0
  %v6362 = vadd.f32 0.0, %v6361
  %6363 = vdwg.mxu0
  %v6364 = vadd.f32 %v6074, %v6173
  %v6365 = vadd.f32 %v6075, %v6176
  %v6366 = vadd.f32 %v6076, %v6179
  %v6367 = vadd.f32 %v6077, %v6182
  %v6368 = vadd.f32 %v6078, %v6185
  %v6369 = vadd.f32 %v6079, %v6188
  %v6370 = vadd.f32 %v6080, %v6191
  %v6371 = vadd.f32 %v6081, %v6194
  %v6372 = vadd.f32 %v6082, %v6197
  %v6373 = vadd.f32 %v6083, %v6200
  %v6374 = vadd.f32 %v6084, %v6203
  %v6375 = vadd.f32 %v6085, %v6206
  %v6376 = vadd.f32 %v6086, %v6209
  %v6377 = vadd.f32 %v6087, %v6212
  %v6378 = vadd.f32 %v6088, %v6215
  %v6379 = vadd.f32 %v6089, %v6218
  %v6380 = vadd.f32 %v6090, %v6221
  %v6381 = vadd.f32 %v6091, %v6224
  %v6382 = vadd.f32 %v6092, %v6227
  %v6383 = vadd.f32 %v6093, %v6230
  %v6384 = vadd.f32 %v6094, %v6233
  %v6385 = vadd.f32 %v6095, %v6236
  %v6386 = vadd.f32 %v6096, %v6239
  %v6387 = vadd.f32 %v6097, %v6242
  %v6388 = vadd.f32 %v6098, %v6245
  %v6389 = vadd.f32 %v6099, %v6248
  %v6390 = vadd.f32 %v6100, %v6251
  %v6391 = vadd.f32 %v6101, %v6254
  %v6392 = vadd.f32 %v6102, %v6257
  %v6393 = vadd.f32 %v6103, %v6260
  %v6394 = vadd.f32 %v6104, %v6263
  %v6395 = vadd.f32 %v6105, %v6266
  %v6396 = vadd.f32 %v6106, %v6269
  %v6397 = vadd.f32 %v6107, %v6272
  %v6398 = vadd.f32 %v6108, %v6275
  %v6399 = vadd.f32 %v6109, %v6278
  %v6400 = vadd.f32 %v6110, %v6281
  %v6401 = vadd.f32 %v6111, %v6284
  %v6402 = vadd.f32 %v6112, %v6287
  %v6403 = vadd.f32 %v6113, %v6290
  %v6404 = vadd.f32 %v6114, %v6293
  %v6405 = vadd.f32 %v6115, %v6296
  %v6406 = vadd.f32 %v6116, %v6299
  %v6407 = vadd.f32 %v6117, %v6302
  %v6408 = vadd.f32 %v6118, %v6305
  %v6409 = vadd.f32 %v6119, %v6308
  %v6410 = vadd.f32 %v6120, %v6311
  %v6411 = vadd.f32 %v6121, %v6314
  %v6412 = vadd.f32 %v6122, %v6317
  %v6413 = vadd.f32 %v6123, %v6320
  %v6414 = vadd.f32 %v6124, %v6323
  %v6415 = vadd.f32 %v6125, %v6326
  %v6416 = vadd.f32 %v6126, %v6329
  %v6417 = vadd.f32 %v6127, %v6332
  %v6418 = vadd.f32 %v6128, %v6335
  %v6419 = vadd.f32 %v6129, %v6338
  %v6420 = vadd.f32 %v6130, %v6341
  %v6421 = vadd.f32 %v6131, %v6344
  %v6422 = vadd.f32 %v6132, %v6347
  %v6423 = vadd.f32 %v6133, %v6350
  %v6424 = vadd.f32 %v6134, %v6353
  %v6425 = vadd.f32 %v6135, %v6356
  %v6426 = vadd.f32 %v6136, %v6359
  %v6427 = vadd.f32 %v6137, %v6362
  %s6428 = scalar_lea.vmem %s4, 640
  %v6429 = vld [vmem:[%s6428] sm:$0xff]
  %v6430 = vld [vmem:[%s6428 + $0x8] sm:$0xff]
  %v6431 = vld [vmem:[%s6428 + $0x10] sm:$0xff]
  %v6432 = vld [vmem:[%s6428 + $0x18] sm:$0xff]
  %v6433 = vld [vmem:[%s6428 + $0x20] sm:$0xff]
  %v6434 = vld [vmem:[%s6428 + $0x28] sm:$0xff]
  %v6435 = vld [vmem:[%s6428 + $0x30] sm:$0xff]
  %v6436 = vld [vmem:[%s6428 + $0x38] sm:$0xff]
  %v6437 = vld [vmem:[%s6428 + $0x40] sm:$0xff]
  %v6438 = vld [vmem:[%s6428 + $0x48] sm:$0xff]
  %v6439 = vld [vmem:[%s6428 + $0x50] sm:$0xff]
  %v6440 = vld [vmem:[%s6428 + $0x58] sm:$0xff]
  %v6441 = vld [vmem:[%s6428 + $0x60] sm:$0xff]
  %v6442 = vld [vmem:[%s6428 + $0x68] sm:$0xff]
  %v6443 = vld [vmem:[%s6428 + $0x70] sm:$0xff]
  %v6444 = vld [vmem:[%s6428 + $0x78] sm:$0xff]
  %6445 = vmatpush.msra.mxu0 %v6444
  %6446 = vmatpush.msra.mxu0 %v6443
  %6447 = vmatpush.msra.mxu0 %v6442
  %6448 = vmatpush.msra.mxu0 %v6441
  %6449 = vmatpush.msra.mxu0 %v6440
  %6450 = vmatpush.msra.mxu0 %v6439
  %6451 = vmatpush.msra.mxu0 %v6438
  %6452 = vmatpush.msra.mxu0 %v6437
  %6453 = vmatpush.msra.mxu0 %v6436
  %6454 = vmatpush.msra.mxu0 %v6435
  %6455 = vmatpush.msra.mxu0 %v6434
  %6456 = vmatpush.msra.mxu0 %v6433
  %6457 = vmatpush.msra.mxu0 %v6432
  %6458 = vmatpush.msra.mxu0 %v6431
  %6459 = vmatpush.msra.mxu0 %v6430
  %6460 = vmatpush.msra.mxu0 %v6429
  %6461 = vmatmul.f32.gmra.mxu0 %v4975
  %v6462 = vpop.f32.mrf.mxu0
  %v6463 = vadd.f32 0.0, %v6462
  %6464 = vmatmul.f32.gmra.mxu0 %v4976
  %v6465 = vpop.f32.mrf.mxu0
  %v6466 = vadd.f32 0.0, %v6465
  %6467 = vmatmul.f32.gmra.mxu0 %v4977
  %v6468 = vpop.f32.mrf.mxu0
  %v6469 = vadd.f32 0.0, %v6468
  %6470 = vmatmul.f32.gmra.mxu0 %v4978
  %v6471 = vpop.f32.mrf.mxu0
  %v6472 = vadd.f32 0.0, %v6471
  %6473 = vmatmul.f32.gmra.mxu0 %v4979
  %v6474 = vpop.f32.mrf.mxu0
  %v6475 = vadd.f32 0.0, %v6474
  %6476 = vmatmul.f32.gmra.mxu0 %v4980
  %v6477 = vpop.f32.mrf.mxu0
  %v6478 = vadd.f32 0.0, %v6477
  %6479 = vmatmul.f32.gmra.mxu0 %v4981
  %v6480 = vpop.f32.mrf.mxu0
  %v6481 = vadd.f32 0.0, %v6480
  %6482 = vmatmul.f32.gmra.mxu0 %v4982
  %v6483 = vpop.f32.mrf.mxu0
  %v6484 = vadd.f32 0.0, %v6483
  %6485 = vmatmul.f32.gmra.mxu0 %v4987
  %v6486 = vpop.f32.mrf.mxu0
  %v6487 = vadd.f32 0.0, %v6486
  %6488 = vmatmul.f32.gmra.mxu0 %v4988
  %v6489 = vpop.f32.mrf.mxu0
  %v6490 = vadd.f32 0.0, %v6489
  %6491 = vmatmul.f32.gmra.mxu0 %v4989
  %v6492 = vpop.f32.mrf.mxu0
  %v6493 = vadd.f32 0.0, %v6492
  %6494 = vmatmul.f32.gmra.mxu0 %v4990
  %v6495 = vpop.f32.mrf.mxu0
  %v6496 = vadd.f32 0.0, %v6495
  %6497 = vmatmul.f32.gmra.mxu0 %v4991
  %v6498 = vpop.f32.mrf.mxu0
  %v6499 = vadd.f32 0.0, %v6498
  %6500 = vmatmul.f32.gmra.mxu0 %v4992
  %v6501 = vpop.f32.mrf.mxu0
  %v6502 = vadd.f32 0.0, %v6501
  %6503 = vmatmul.f32.gmra.mxu0 %v4993
  %v6504 = vpop.f32.mrf.mxu0
  %v6505 = vadd.f32 0.0, %v6504
  %6506 = vmatmul.f32.gmra.mxu0 %v4994
  %v6507 = vpop.f32.mrf.mxu0
  %v6508 = vadd.f32 0.0, %v6507
  %6509 = vmatmul.f32.gmra.mxu0 %v4999
  %v6510 = vpop.f32.mrf.mxu0
  %v6511 = vadd.f32 0.0, %v6510
  %6512 = vmatmul.f32.gmra.mxu0 %v5000
  %v6513 = vpop.f32.mrf.mxu0
  %v6514 = vadd.f32 0.0, %v6513
  %6515 = vmatmul.f32.gmra.mxu0 %v5001
  %v6516 = vpop.f32.mrf.mxu0
  %v6517 = vadd.f32 0.0, %v6516
  %6518 = vmatmul.f32.gmra.mxu0 %v5002
  %v6519 = vpop.f32.mrf.mxu0
  %v6520 = vadd.f32 0.0, %v6519
  %6521 = vmatmul.f32.gmra.mxu0 %v5003
  %v6522 = vpop.f32.mrf.mxu0
  %v6523 = vadd.f32 0.0, %v6522
  %6524 = vmatmul.f32.gmra.mxu0 %v5004
  %v6525 = vpop.f32.mrf.mxu0
  %v6526 = vadd.f32 0.0, %v6525
  %6527 = vmatmul.f32.gmra.mxu0 %v5005
  %v6528 = vpop.f32.mrf.mxu0
  %v6529 = vadd.f32 0.0, %v6528
  %6530 = vmatmul.f32.gmra.mxu0 %v5006
  %v6531 = vpop.f32.mrf.mxu0
  %v6532 = vadd.f32 0.0, %v6531
  %6533 = vmatmul.f32.gmra.mxu0 %v5011
  %v6534 = vpop.f32.mrf.mxu0
  %v6535 = vadd.f32 0.0, %v6534
  %6536 = vmatmul.f32.gmra.mxu0 %v5012
  %v6537 = vpop.f32.mrf.mxu0
  %v6538 = vadd.f32 0.0, %v6537
  %6539 = vmatmul.f32.gmra.mxu0 %v5013
  %v6540 = vpop.f32.mrf.mxu0
  %v6541 = vadd.f32 0.0, %v6540
  %6542 = vmatmul.f32.gmra.mxu0 %v5014
  %v6543 = vpop.f32.mrf.mxu0
  %v6544 = vadd.f32 0.0, %v6543
  %6545 = vmatmul.f32.gmra.mxu0 %v5015
  %v6546 = vpop.f32.mrf.mxu0
  %v6547 = vadd.f32 0.0, %v6546
  %6548 = vmatmul.f32.gmra.mxu0 %v5016
  %v6549 = vpop.f32.mrf.mxu0
  %v6550 = vadd.f32 0.0, %v6549
  %6551 = vmatmul.f32.gmra.mxu0 %v5017
  %v6552 = vpop.f32.mrf.mxu0
  %v6553 = vadd.f32 0.0, %v6552
  %6554 = vmatmul.f32.gmra.mxu0 %v5018
  %v6555 = vpop.f32.mrf.mxu0
  %v6556 = vadd.f32 0.0, %v6555
  %6557 = vmatmul.f32.gmra.mxu0 %v5023
  %v6558 = vpop.f32.mrf.mxu0
  %v6559 = vadd.f32 0.0, %v6558
  %6560 = vmatmul.f32.gmra.mxu0 %v5024
  %v6561 = vpop.f32.mrf.mxu0
  %v6562 = vadd.f32 0.0, %v6561
  %6563 = vmatmul.f32.gmra.mxu0 %v5025
  %v6564 = vpop.f32.mrf.mxu0
  %v6565 = vadd.f32 0.0, %v6564
  %6566 = vmatmul.f32.gmra.mxu0 %v5026
  %v6567 = vpop.f32.mrf.mxu0
  %v6568 = vadd.f32 0.0, %v6567
  %6569 = vmatmul.f32.gmra.mxu0 %v5027
  %v6570 = vpop.f32.mrf.mxu0
  %v6571 = vadd.f32 0.0, %v6570
  %6572 = vmatmul.f32.gmra.mxu0 %v5028
  %v6573 = vpop.f32.mrf.mxu0
  %v6574 = vadd.f32 0.0, %v6573
  %6575 = vmatmul.f32.gmra.mxu0 %v5029
  %v6576 = vpop.f32.mrf.mxu0
  %v6577 = vadd.f32 0.0, %v6576
  %6578 = vmatmul.f32.gmra.mxu0 %v5030
  %v6579 = vpop.f32.mrf.mxu0
  %v6580 = vadd.f32 0.0, %v6579
  %6581 = vmatmul.f32.gmra.mxu0 %v5035
  %v6582 = vpop.f32.mrf.mxu0
  %v6583 = vadd.f32 0.0, %v6582
  %6584 = vmatmul.f32.gmra.mxu0 %v5036
  %v6585 = vpop.f32.mrf.mxu0
  %v6586 = vadd.f32 0.0, %v6585
  %6587 = vmatmul.f32.gmra.mxu0 %v5037
  %v6588 = vpop.f32.mrf.mxu0
  %v6589 = vadd.f32 0.0, %v6588
  %6590 = vmatmul.f32.gmra.mxu0 %v5038
  %v6591 = vpop.f32.mrf.mxu0
  %v6592 = vadd.f32 0.0, %v6591
  %6593 = vmatmul.f32.gmra.mxu0 %v5039
  %v6594 = vpop.f32.mrf.mxu0
  %v6595 = vadd.f32 0.0, %v6594
  %6596 = vmatmul.f32.gmra.mxu0 %v5040
  %v6597 = vpop.f32.mrf.mxu0
  %v6598 = vadd.f32 0.0, %v6597
  %6599 = vmatmul.f32.gmra.mxu0 %v5041
  %v6600 = vpop.f32.mrf.mxu0
  %v6601 = vadd.f32 0.0, %v6600
  %6602 = vmatmul.f32.gmra.mxu0 %v5042
  %v6603 = vpop.f32.mrf.mxu0
  %v6604 = vadd.f32 0.0, %v6603
  %6605 = vmatmul.f32.gmra.mxu0 %v5047
  %v6606 = vpop.f32.mrf.mxu0
  %v6607 = vadd.f32 0.0, %v6606
  %6608 = vmatmul.f32.gmra.mxu0 %v5048
  %v6609 = vpop.f32.mrf.mxu0
  %v6610 = vadd.f32 0.0, %v6609
  %6611 = vmatmul.f32.gmra.mxu0 %v5049
  %v6612 = vpop.f32.mrf.mxu0
  %v6613 = vadd.f32 0.0, %v6612
  %6614 = vmatmul.f32.gmra.mxu0 %v5050
  %v6615 = vpop.f32.mrf.mxu0
  %v6616 = vadd.f32 0.0, %v6615
  %6617 = vmatmul.f32.gmra.mxu0 %v5051
  %v6618 = vpop.f32.mrf.mxu0
  %v6619 = vadd.f32 0.0, %v6618
  %6620 = vmatmul.f32.gmra.mxu0 %v5052
  %v6621 = vpop.f32.mrf.mxu0
  %v6622 = vadd.f32 0.0, %v6621
  %6623 = vmatmul.f32.gmra.mxu0 %v5053
  %v6624 = vpop.f32.mrf.mxu0
  %v6625 = vadd.f32 0.0, %v6624
  %6626 = vmatmul.f32.gmra.mxu0 %v5054
  %v6627 = vpop.f32.mrf.mxu0
  %v6628 = vadd.f32 0.0, %v6627
  %6629 = vmatmul.f32.gmra.mxu0 %v5059
  %v6630 = vpop.f32.mrf.mxu0
  %v6631 = vadd.f32 0.0, %v6630
  %6632 = vmatmul.f32.gmra.mxu0 %v5060
  %v6633 = vpop.f32.mrf.mxu0
  %v6634 = vadd.f32 0.0, %v6633
  %6635 = vmatmul.f32.gmra.mxu0 %v5061
  %v6636 = vpop.f32.mrf.mxu0
  %v6637 = vadd.f32 0.0, %v6636
  %6638 = vmatmul.f32.gmra.mxu0 %v5062
  %v6639 = vpop.f32.mrf.mxu0
  %v6640 = vadd.f32 0.0, %v6639
  %6641 = vmatmul.f32.gmra.mxu0 %v5063
  %v6642 = vpop.f32.mrf.mxu0
  %v6643 = vadd.f32 0.0, %v6642
  %6644 = vmatmul.f32.gmra.mxu0 %v5064
  %v6645 = vpop.f32.mrf.mxu0
  %v6646 = vadd.f32 0.0, %v6645
  %6647 = vmatmul.f32.gmra.mxu0 %v5065
  %v6648 = vpop.f32.mrf.mxu0
  %v6649 = vadd.f32 0.0, %v6648
  %6650 = vmatmul.f32.gmra.mxu0 %v5066
  %v6651 = vpop.f32.mrf.mxu0
  %v6652 = vadd.f32 0.0, %v6651
  %6653 = vdwg.mxu0
  %v6654 = vadd.f32 %v6364, %v6463
  %v6655 = vadd.f32 %v6365, %v6466
  %v6656 = vadd.f32 %v6366, %v6469
  %v6657 = vadd.f32 %v6367, %v6472
  %v6658 = vadd.f32 %v6368, %v6475
  %v6659 = vadd.f32 %v6369, %v6478
  %v6660 = vadd.f32 %v6370, %v6481
  %v6661 = vadd.f32 %v6371, %v6484
  %v6662 = vadd.f32 %v6372, %v6487
  %v6663 = vadd.f32 %v6373, %v6490
  %v6664 = vadd.f32 %v6374, %v6493
  %v6665 = vadd.f32 %v6375, %v6496
  %v6666 = vadd.f32 %v6376, %v6499
  %v6667 = vadd.f32 %v6377, %v6502
  %v6668 = vadd.f32 %v6378, %v6505
  %v6669 = vadd.f32 %v6379, %v6508
  %v6670 = vadd.f32 %v6380, %v6511
  %v6671 = vadd.f32 %v6381, %v6514
  %v6672 = vadd.f32 %v6382, %v6517
  %v6673 = vadd.f32 %v6383, %v6520
  %v6674 = vadd.f32 %v6384, %v6523
  %v6675 = vadd.f32 %v6385, %v6526
  %v6676 = vadd.f32 %v6386, %v6529
  %v6677 = vadd.f32 %v6387, %v6532
  %v6678 = vadd.f32 %v6388, %v6535
  %v6679 = vadd.f32 %v6389, %v6538
  %v6680 = vadd.f32 %v6390, %v6541
  %v6681 = vadd.f32 %v6391, %v6544
  %v6682 = vadd.f32 %v6392, %v6547
  %v6683 = vadd.f32 %v6393, %v6550
  %v6684 = vadd.f32 %v6394, %v6553
  %v6685 = vadd.f32 %v6395, %v6556
  %v6686 = vadd.f32 %v6396, %v6559
  %v6687 = vadd.f32 %v6397, %v6562
  %v6688 = vadd.f32 %v6398, %v6565
  %v6689 = vadd.f32 %v6399, %v6568
  %v6690 = vadd.f32 %v6400, %v6571
  %v6691 = vadd.f32 %v6401, %v6574
  %v6692 = vadd.f32 %v6402, %v6577
  %v6693 = vadd.f32 %v6403, %v6580
  %v6694 = vadd.f32 %v6404, %v6583
  %v6695 = vadd.f32 %v6405, %v6586
  %v6696 = vadd.f32 %v6406, %v6589
  %v6697 = vadd.f32 %v6407, %v6592
  %v6698 = vadd.f32 %v6408, %v6595
  %v6699 = vadd.f32 %v6409, %v6598
  %v6700 = vadd.f32 %v6410, %v6601
  %v6701 = vadd.f32 %v6411, %v6604
  %v6702 = vadd.f32 %v6412, %v6607
  %v6703 = vadd.f32 %v6413, %v6610
  %v6704 = vadd.f32 %v6414, %v6613
  %v6705 = vadd.f32 %v6415, %v6616
  %v6706 = vadd.f32 %v6416, %v6619
  %v6707 = vadd.f32 %v6417, %v6622
  %v6708 = vadd.f32 %v6418, %v6625
  %v6709 = vadd.f32 %v6419, %v6628
  %v6710 = vadd.f32 %v6420, %v6631
  %v6711 = vadd.f32 %v6421, %v6634
  %v6712 = vadd.f32 %v6422, %v6637
  %v6713 = vadd.f32 %v6423, %v6640
  %v6714 = vadd.f32 %v6424, %v6643
  %v6715 = vadd.f32 %v6425, %v6646
  %v6716 = vadd.f32 %v6426, %v6649
  %v6717 = vadd.f32 %v6427, %v6652
  %s6718 = scalar_lea.vmem %s4, 768
  %v6719 = vld [vmem:[%s6718] sm:$0xff]
  %v6720 = vld [vmem:[%s6718 + $0x8] sm:$0xff]
  %v6721 = vld [vmem:[%s6718 + $0x10] sm:$0xff]
  %v6722 = vld [vmem:[%s6718 + $0x18] sm:$0xff]
  %v6723 = vld [vmem:[%s6718 + $0x20] sm:$0xff]
  %v6724 = vld [vmem:[%s6718 + $0x28] sm:$0xff]
  %v6725 = vld [vmem:[%s6718 + $0x30] sm:$0xff]
  %v6726 = vld [vmem:[%s6718 + $0x38] sm:$0xff]
  %v6727 = vld [vmem:[%s6718 + $0x40] sm:$0xff]
  %v6728 = vld [vmem:[%s6718 + $0x48] sm:$0xff]
  %v6729 = vld [vmem:[%s6718 + $0x50] sm:$0xff]
  %v6730 = vld [vmem:[%s6718 + $0x58] sm:$0xff]
  %v6731 = vld [vmem:[%s6718 + $0x60] sm:$0xff]
  %v6732 = vld [vmem:[%s6718 + $0x68] sm:$0xff]
  %v6733 = vld [vmem:[%s6718 + $0x70] sm:$0xff]
  %v6734 = vld [vmem:[%s6718 + $0x78] sm:$0xff]
  %6735 = vmatpush.msra.mxu0 %v6734
  %6736 = vmatpush.msra.mxu0 %v6733
  %6737 = vmatpush.msra.mxu0 %v6732
  %6738 = vmatpush.msra.mxu0 %v6731
  %6739 = vmatpush.msra.mxu0 %v6730
  %6740 = vmatpush.msra.mxu0 %v6729
  %6741 = vmatpush.msra.mxu0 %v6728
  %6742 = vmatpush.msra.mxu0 %v6727
  %6743 = vmatpush.msra.mxu0 %v6726
  %6744 = vmatpush.msra.mxu0 %v6725
  %6745 = vmatpush.msra.mxu0 %v6724
  %6746 = vmatpush.msra.mxu0 %v6723
  %6747 = vmatpush.msra.mxu0 %v6722
  %6748 = vmatpush.msra.mxu0 %v6721
  %6749 = vmatpush.msra.mxu0 %v6720
  %6750 = vmatpush.msra.mxu0 %v6719
  %6751 = vmatmul.f32.gmra.mxu0 %v4976
  %v6752 = vpop.f32.mrf.mxu0
  %v6753 = vadd.f32 0.0, %v6752
  %6754 = vmatmul.f32.gmra.mxu0 %v4977
  %v6755 = vpop.f32.mrf.mxu0
  %v6756 = vadd.f32 0.0, %v6755
  %6757 = vmatmul.f32.gmra.mxu0 %v4978
  %v6758 = vpop.f32.mrf.mxu0
  %v6759 = vadd.f32 0.0, %v6758
  %6760 = vmatmul.f32.gmra.mxu0 %v4979
  %v6761 = vpop.f32.mrf.mxu0
  %v6762 = vadd.f32 0.0, %v6761
  %6763 = vmatmul.f32.gmra.mxu0 %v4980
  %v6764 = vpop.f32.mrf.mxu0
  %v6765 = vadd.f32 0.0, %v6764
  %6766 = vmatmul.f32.gmra.mxu0 %v4981
  %v6767 = vpop.f32.mrf.mxu0
  %v6768 = vadd.f32 0.0, %v6767
  %6769 = vmatmul.f32.gmra.mxu0 %v4982
  %v6770 = vpop.f32.mrf.mxu0
  %v6771 = vadd.f32 0.0, %v6770
  %6772 = vmatmul.f32.gmra.mxu0 %v4983
  %v6773 = vpop.f32.mrf.mxu0
  %v6774 = vadd.f32 0.0, %v6773
  %6775 = vmatmul.f32.gmra.mxu0 %v4988
  %v6776 = vpop.f32.mrf.mxu0
  %v6777 = vadd.f32 0.0, %v6776
  %6778 = vmatmul.f32.gmra.mxu0 %v4989
  %v6779 = vpop.f32.mrf.mxu0
  %v6780 = vadd.f32 0.0, %v6779
  %6781 = vmatmul.f32.gmra.mxu0 %v4990
  %v6782 = vpop.f32.mrf.mxu0
  %v6783 = vadd.f32 0.0, %v6782
  %6784 = vmatmul.f32.gmra.mxu0 %v4991
  %v6785 = vpop.f32.mrf.mxu0
  %v6786 = vadd.f32 0.0, %v6785
  %6787 = vmatmul.f32.gmra.mxu0 %v4992
  %v6788 = vpop.f32.mrf.mxu0
  %v6789 = vadd.f32 0.0, %v6788
  %6790 = vmatmul.f32.gmra.mxu0 %v4993
  %v6791 = vpop.f32.mrf.mxu0
  %v6792 = vadd.f32 0.0, %v6791
  %6793 = vmatmul.f32.gmra.mxu0 %v4994
  %v6794 = vpop.f32.mrf.mxu0
  %v6795 = vadd.f32 0.0, %v6794
  %6796 = vmatmul.f32.gmra.mxu0 %v4995
  %v6797 = vpop.f32.mrf.mxu0
  %v6798 = vadd.f32 0.0, %v6797
  %6799 = vmatmul.f32.gmra.mxu0 %v5000
  %v6800 = vpop.f32.mrf.mxu0
  %v6801 = vadd.f32 0.0, %v6800
  %6802 = vmatmul.f32.gmra.mxu0 %v5001
  %v6803 = vpop.f32.mrf.mxu0
  %v6804 = vadd.f32 0.0, %v6803
  %6805 = vmatmul.f32.gmra.mxu0 %v5002
  %v6806 = vpop.f32.mrf.mxu0
  %v6807 = vadd.f32 0.0, %v6806
  %6808 = vmatmul.f32.gmra.mxu0 %v5003
  %v6809 = vpop.f32.mrf.mxu0
  %v6810 = vadd.f32 0.0, %v6809
  %6811 = vmatmul.f32.gmra.mxu0 %v5004
  %v6812 = vpop.f32.mrf.mxu0
  %v6813 = vadd.f32 0.0, %v6812
  %6814 = vmatmul.f32.gmra.mxu0 %v5005
  %v6815 = vpop.f32.mrf.mxu0
  %v6816 = vadd.f32 0.0, %v6815
  %6817 = vmatmul.f32.gmra.mxu0 %v5006
  %v6818 = vpop.f32.mrf.mxu0
  %v6819 = vadd.f32 0.0, %v6818
  %6820 = vmatmul.f32.gmra.mxu0 %v5007
  %v6821 = vpop.f32.mrf.mxu0
  %v6822 = vadd.f32 0.0, %v6821
  %6823 = vmatmul.f32.gmra.mxu0 %v5012
  %v6824 = vpop.f32.mrf.mxu0
  %v6825 = vadd.f32 0.0, %v6824
  %6826 = vmatmul.f32.gmra.mxu0 %v5013
  %v6827 = vpop.f32.mrf.mxu0
  %v6828 = vadd.f32 0.0, %v6827
  %6829 = vmatmul.f32.gmra.mxu0 %v5014
  %v6830 = vpop.f32.mrf.mxu0
  %v6831 = vadd.f32 0.0, %v6830
  %6832 = vmatmul.f32.gmra.mxu0 %v5015
  %v6833 = vpop.f32.mrf.mxu0
  %v6834 = vadd.f32 0.0, %v6833
  %6835 = vmatmul.f32.gmra.mxu0 %v5016
  %v6836 = vpop.f32.mrf.mxu0
  %v6837 = vadd.f32 0.0, %v6836
  %6838 = vmatmul.f32.gmra.mxu0 %v5017
  %v6839 = vpop.f32.mrf.mxu0
  %v6840 = vadd.f32 0.0, %v6839
  %6841 = vmatmul.f32.gmra.mxu0 %v5018
  %v6842 = vpop.f32.mrf.mxu0
  %v6843 = vadd.f32 0.0, %v6842
  %6844 = vmatmul.f32.gmra.mxu0 %v5019
  %v6845 = vpop.f32.mrf.mxu0
  %v6846 = vadd.f32 0.0, %v6845
  %6847 = vmatmul.f32.gmra.mxu0 %v5024
  %v6848 = vpop.f32.mrf.mxu0
  %v6849 = vadd.f32 0.0, %v6848
  %6850 = vmatmul.f32.gmra.mxu0 %v5025
  %v6851 = vpop.f32.mrf.mxu0
  %v6852 = vadd.f32 0.0, %v6851
  %6853 = vmatmul.f32.gmra.mxu0 %v5026
  %v6854 = vpop.f32.mrf.mxu0
  %v6855 = vadd.f32 0.0, %v6854
  %6856 = vmatmul.f32.gmra.mxu0 %v5027
  %v6857 = vpop.f32.mrf.mxu0
  %v6858 = vadd.f32 0.0, %v6857
  %6859 = vmatmul.f32.gmra.mxu0 %v5028
  %v6860 = vpop.f32.mrf.mxu0
  %v6861 = vadd.f32 0.0, %v6860
  %6862 = vmatmul.f32.gmra.mxu0 %v5029
  %v6863 = vpop.f32.mrf.mxu0
  %v6864 = vadd.f32 0.0, %v6863
  %6865 = vmatmul.f32.gmra.mxu0 %v5030
  %v6866 = vpop.f32.mrf.mxu0
  %v6867 = vadd.f32 0.0, %v6866
  %6868 = vmatmul.f32.gmra.mxu0 %v5031
  %v6869 = vpop.f32.mrf.mxu0
  %v6870 = vadd.f32 0.0, %v6869
  %6871 = vmatmul.f32.gmra.mxu0 %v5036
  %v6872 = vpop.f32.mrf.mxu0
  %v6873 = vadd.f32 0.0, %v6872
  %6874 = vmatmul.f32.gmra.mxu0 %v5037
  %v6875 = vpop.f32.mrf.mxu0
  %v6876 = vadd.f32 0.0, %v6875
  %6877 = vmatmul.f32.gmra.mxu0 %v5038
  %v6878 = vpop.f32.mrf.mxu0
  %v6879 = vadd.f32 0.0, %v6878
  %6880 = vmatmul.f32.gmra.mxu0 %v5039
  %v6881 = vpop.f32.mrf.mxu0
  %v6882 = vadd.f32 0.0, %v6881
  %6883 = vmatmul.f32.gmra.mxu0 %v5040
  %v6884 = vpop.f32.mrf.mxu0
  %v6885 = vadd.f32 0.0, %v6884
  %6886 = vmatmul.f32.gmra.mxu0 %v5041
  %v6887 = vpop.f32.mrf.mxu0
  %v6888 = vadd.f32 0.0, %v6887
  %6889 = vmatmul.f32.gmra.mxu0 %v5042
  %v6890 = vpop.f32.mrf.mxu0
  %v6891 = vadd.f32 0.0, %v6890
  %6892 = vmatmul.f32.gmra.mxu0 %v5043
  %v6893 = vpop.f32.mrf.mxu0
  %v6894 = vadd.f32 0.0, %v6893
  %6895 = vmatmul.f32.gmra.mxu0 %v5048
  %v6896 = vpop.f32.mrf.mxu0
  %v6897 = vadd.f32 0.0, %v6896
  %6898 = vmatmul.f32.gmra.mxu0 %v5049
  %v6899 = vpop.f32.mrf.mxu0
  %v6900 = vadd.f32 0.0, %v6899
  %6901 = vmatmul.f32.gmra.mxu0 %v5050
  %v6902 = vpop.f32.mrf.mxu0
  %v6903 = vadd.f32 0.0, %v6902
  %6904 = vmatmul.f32.gmra.mxu0 %v5051
  %v6905 = vpop.f32.mrf.mxu0
  %v6906 = vadd.f32 0.0, %v6905
  %6907 = vmatmul.f32.gmra.mxu0 %v5052
  %v6908 = vpop.f32.mrf.mxu0
  %v6909 = vadd.f32 0.0, %v6908
  %6910 = vmatmul.f32.gmra.mxu0 %v5053
  %v6911 = vpop.f32.mrf.mxu0
  %v6912 = vadd.f32 0.0, %v6911
  %6913 = vmatmul.f32.gmra.mxu0 %v5054
  %v6914 = vpop.f32.mrf.mxu0
  %v6915 = vadd.f32 0.0, %v6914
  %6916 = vmatmul.f32.gmra.mxu0 %v5055
  %v6917 = vpop.f32.mrf.mxu0
  %v6918 = vadd.f32 0.0, %v6917
  %6919 = vmatmul.f32.gmra.mxu0 %v5060
  %v6920 = vpop.f32.mrf.mxu0
  %v6921 = vadd.f32 0.0, %v6920
  %6922 = vmatmul.f32.gmra.mxu0 %v5061
  %v6923 = vpop.f32.mrf.mxu0
  %v6924 = vadd.f32 0.0, %v6923
  %6925 = vmatmul.f32.gmra.mxu0 %v5062
  %v6926 = vpop.f32.mrf.mxu0
  %v6927 = vadd.f32 0.0, %v6926
  %6928 = vmatmul.f32.gmra.mxu0 %v5063
  %v6929 = vpop.f32.mrf.mxu0
  %v6930 = vadd.f32 0.0, %v6929
  %6931 = vmatmul.f32.gmra.mxu0 %v5064
  %v6932 = vpop.f32.mrf.mxu0
  %v6933 = vadd.f32 0.0, %v6932
  %6934 = vmatmul.f32.gmra.mxu0 %v5065
  %v6935 = vpop.f32.mrf.mxu0
  %v6936 = vadd.f32 0.0, %v6935
  %6937 = vmatmul.f32.gmra.mxu0 %v5066
  %v6938 = vpop.f32.mrf.mxu0
  %v6939 = vadd.f32 0.0, %v6938
  %6940 = vmatmul.f32.gmra.mxu0 %v5067
  %v6941 = vpop.f32.mrf.mxu0
  %v6942 = vadd.f32 0.0, %v6941
  %6943 = vdwg.mxu0
  %v6944 = vadd.f32 %v6654, %v6753
  %v6945 = vadd.f32 %v6655, %v6756
  %v6946 = vadd.f32 %v6656, %v6759
  %v6947 = vadd.f32 %v6657, %v6762
  %v6948 = vadd.f32 %v6658, %v6765
  %v6949 = vadd.f32 %v6659, %v6768
  %v6950 = vadd.f32 %v6660, %v6771
  %v6951 = vadd.f32 %v6661, %v6774
  %v6952 = vadd.f32 %v6662, %v6777
  %v6953 = vadd.f32 %v6663, %v6780
  %v6954 = vadd.f32 %v6664, %v6783
  %v6955 = vadd.f32 %v6665, %v6786
  %v6956 = vadd.f32 %v6666, %v6789
  %v6957 = vadd.f32 %v6667, %v6792
  %v6958 = vadd.f32 %v6668, %v6795
  %v6959 = vadd.f32 %v6669, %v6798
  %v6960 = vadd.f32 %v6670, %v6801
  %v6961 = vadd.f32 %v6671, %v6804
  %v6962 = vadd.f32 %v6672, %v6807
  %v6963 = vadd.f32 %v6673, %v6810
  %v6964 = vadd.f32 %v6674, %v6813
  %v6965 = vadd.f32 %v6675, %v6816
  %v6966 = vadd.f32 %v6676, %v6819
  %v6967 = vadd.f32 %v6677, %v6822
  %v6968 = vadd.f32 %v6678, %v6825
  %v6969 = vadd.f32 %v6679, %v6828
  %v6970 = vadd.f32 %v6680, %v6831
  %v6971 = vadd.f32 %v6681, %v6834
  %v6972 = vadd.f32 %v6682, %v6837
  %v6973 = vadd.f32 %v6683, %v6840
  %v6974 = vadd.f32 %v6684, %v6843
  %v6975 = vadd.f32 %v6685, %v6846
  %v6976 = vadd.f32 %v6686, %v6849
  %v6977 = vadd.f32 %v6687, %v6852
  %v6978 = vadd.f32 %v6688, %v6855
  %v6979 = vadd.f32 %v6689, %v6858
  %v6980 = vadd.f32 %v6690, %v6861
  %v6981 = vadd.f32 %v6691, %v6864
  %v6982 = vadd.f32 %v6692, %v6867
  %v6983 = vadd.f32 %v6693, %v6870
  %v6984 = vadd.f32 %v6694, %v6873
  %v6985 = vadd.f32 %v6695, %v6876
  %v6986 = vadd.f32 %v6696, %v6879
  %v6987 = vadd.f32 %v6697, %v6882
  %v6988 = vadd.f32 %v6698, %v6885
  %v6989 = vadd.f32 %v6699, %v6888
  %v6990 = vadd.f32 %v6700, %v6891
  %v6991 = vadd.f32 %v6701, %v6894
  %v6992 = vadd.f32 %v6702, %v6897
  %v6993 = vadd.f32 %v6703, %v6900
  %v6994 = vadd.f32 %v6704, %v6903
  %v6995 = vadd.f32 %v6705, %v6906
  %v6996 = vadd.f32 %v6706, %v6909
  %v6997 = vadd.f32 %v6707, %v6912
  %v6998 = vadd.f32 %v6708, %v6915
  %v6999 = vadd.f32 %v6709, %v6918
  %v7000 = vadd.f32 %v6710, %v6921
  %v7001 = vadd.f32 %v6711, %v6924
  %v7002 = vadd.f32 %v6712, %v6927
  %v7003 = vadd.f32 %v6713, %v6930
  %v7004 = vadd.f32 %v6714, %v6933
  %v7005 = vadd.f32 %v6715, %v6936
  %v7006 = vadd.f32 %v6716, %v6939
  %v7007 = vadd.f32 %v6717, %v6942
  %s7008 = scalar_lea.vmem %s4, 896
  %v7009 = vld [vmem:[%s7008] sm:$0xff]
  %v7010 = vld [vmem:[%s7008 + $0x8] sm:$0xff]
  %v7011 = vld [vmem:[%s7008 + $0x10] sm:$0xff]
  %v7012 = vld [vmem:[%s7008 + $0x18] sm:$0xff]
  %v7013 = vld [vmem:[%s7008 + $0x20] sm:$0xff]
  %v7014 = vld [vmem:[%s7008 + $0x28] sm:$0xff]
  %v7015 = vld [vmem:[%s7008 + $0x30] sm:$0xff]
  %v7016 = vld [vmem:[%s7008 + $0x38] sm:$0xff]
  %v7017 = vld [vmem:[%s7008 + $0x40] sm:$0xff]
  %v7018 = vld [vmem:[%s7008 + $0x48] sm:$0xff]
  %v7019 = vld [vmem:[%s7008 + $0x50] sm:$0xff]
  %v7020 = vld [vmem:[%s7008 + $0x58] sm:$0xff]
  %v7021 = vld [vmem:[%s7008 + $0x60] sm:$0xff]
  %v7022 = vld [vmem:[%s7008 + $0x68] sm:$0xff]
  %v7023 = vld [vmem:[%s7008 + $0x70] sm:$0xff]
  %v7024 = vld [vmem:[%s7008 + $0x78] sm:$0xff]
  %7025 = vmatpush.msra.mxu0 %v7024
  %7026 = vmatpush.msra.mxu0 %v7023
  %7027 = vmatpush.msra.mxu0 %v7022
  %7028 = vmatpush.msra.mxu0 %v7021
  %7029 = vmatpush.msra.mxu0 %v7020
  %7030 = vmatpush.msra.mxu0 %v7019
  %7031 = vmatpush.msra.mxu0 %v7018
  %7032 = vmatpush.msra.mxu0 %v7017
  %7033 = vmatpush.msra.mxu0 %v7016
  %7034 = vmatpush.msra.mxu0 %v7015
  %7035 = vmatpush.msra.mxu0 %v7014
  %7036 = vmatpush.msra.mxu0 %v7013
  %7037 = vmatpush.msra.mxu0 %v7012
  %7038 = vmatpush.msra.mxu0 %v7011
  %7039 = vmatpush.msra.mxu0 %v7010
  %7040 = vmatpush.msra.mxu0 %v7009
  %7041 = vmatmul.f32.gmra.mxu0 %v4977
  %v7042 = vpop.f32.mrf.mxu0
  %v7043 = vadd.f32 0.0, %v7042
  %7044 = vmatmul.f32.gmra.mxu0 %v4978
  %v7045 = vpop.f32.mrf.mxu0
  %v7046 = vadd.f32 0.0, %v7045
  %7047 = vmatmul.f32.gmra.mxu0 %v4979
  %v7048 = vpop.f32.mrf.mxu0
  %v7049 = vadd.f32 0.0, %v7048
  %7050 = vmatmul.f32.gmra.mxu0 %v4980
  %v7051 = vpop.f32.mrf.mxu0
  %v7052 = vadd.f32 0.0, %v7051
  %7053 = vmatmul.f32.gmra.mxu0 %v4981
  %v7054 = vpop.f32.mrf.mxu0
  %v7055 = vadd.f32 0.0, %v7054
  %7056 = vmatmul.f32.gmra.mxu0 %v4982
  %v7057 = vpop.f32.mrf.mxu0
  %v7058 = vadd.f32 0.0, %v7057
  %7059 = vmatmul.f32.gmra.mxu0 %v4983
  %v7060 = vpop.f32.mrf.mxu0
  %v7061 = vadd.f32 0.0, %v7060
  %7062 = vmatmul.f32.gmra.mxu0 %v4984
  %v7063 = vpop.f32.mrf.mxu0
  %v7064 = vadd.f32 0.0, %v7063
  %7065 = vmatmul.f32.gmra.mxu0 %v4989
  %v7066 = vpop.f32.mrf.mxu0
  %v7067 = vadd.f32 0.0, %v7066
  %7068 = vmatmul.f32.gmra.mxu0 %v4990
  %v7069 = vpop.f32.mrf.mxu0
  %v7070 = vadd.f32 0.0, %v7069
  %7071 = vmatmul.f32.gmra.mxu0 %v4991
  %v7072 = vpop.f32.mrf.mxu0
  %v7073 = vadd.f32 0.0, %v7072
  %7074 = vmatmul.f32.gmra.mxu0 %v4992
  %v7075 = vpop.f32.mrf.mxu0
  %v7076 = vadd.f32 0.0, %v7075
  %7077 = vmatmul.f32.gmra.mxu0 %v4993
  %v7078 = vpop.f32.mrf.mxu0
  %v7079 = vadd.f32 0.0, %v7078
  %7080 = vmatmul.f32.gmra.mxu0 %v4994
  %v7081 = vpop.f32.mrf.mxu0
  %v7082 = vadd.f32 0.0, %v7081
  %7083 = vmatmul.f32.gmra.mxu0 %v4995
  %v7084 = vpop.f32.mrf.mxu0
  %v7085 = vadd.f32 0.0, %v7084
  %7086 = vmatmul.f32.gmra.mxu0 %v4996
  %v7087 = vpop.f32.mrf.mxu0
  %v7088 = vadd.f32 0.0, %v7087
  %7089 = vmatmul.f32.gmra.mxu0 %v5001
  %v7090 = vpop.f32.mrf.mxu0
  %v7091 = vadd.f32 0.0, %v7090
  %7092 = vmatmul.f32.gmra.mxu0 %v5002
  %v7093 = vpop.f32.mrf.mxu0
  %v7094 = vadd.f32 0.0, %v7093
  %7095 = vmatmul.f32.gmra.mxu0 %v5003
  %v7096 = vpop.f32.mrf.mxu0
  %v7097 = vadd.f32 0.0, %v7096
  %7098 = vmatmul.f32.gmra.mxu0 %v5004
  %v7099 = vpop.f32.mrf.mxu0
  %v7100 = vadd.f32 0.0, %v7099
  %7101 = vmatmul.f32.gmra.mxu0 %v5005
  %v7102 = vpop.f32.mrf.mxu0
  %v7103 = vadd.f32 0.0, %v7102
  %7104 = vmatmul.f32.gmra.mxu0 %v5006
  %v7105 = vpop.f32.mrf.mxu0
  %v7106 = vadd.f32 0.0, %v7105
  %7107 = vmatmul.f32.gmra.mxu0 %v5007
  %v7108 = vpop.f32.mrf.mxu0
  %v7109 = vadd.f32 0.0, %v7108
  %7110 = vmatmul.f32.gmra.mxu0 %v5008
  %v7111 = vpop.f32.mrf.mxu0
  %v7112 = vadd.f32 0.0, %v7111
  %7113 = vmatmul.f32.gmra.mxu0 %v5013
  %v7114 = vpop.f32.mrf.mxu0
  %v7115 = vadd.f32 0.0, %v7114
  %7116 = vmatmul.f32.gmra.mxu0 %v5014
  %v7117 = vpop.f32.mrf.mxu0
  %v7118 = vadd.f32 0.0, %v7117
  %7119 = vmatmul.f32.gmra.mxu0 %v5015
  %v7120 = vpop.f32.mrf.mxu0
  %v7121 = vadd.f32 0.0, %v7120
  %7122 = vmatmul.f32.gmra.mxu0 %v5016
  %v7123 = vpop.f32.mrf.mxu0
  %v7124 = vadd.f32 0.0, %v7123
  %7125 = vmatmul.f32.gmra.mxu0 %v5017
  %v7126 = vpop.f32.mrf.mxu0
  %v7127 = vadd.f32 0.0, %v7126
  %7128 = vmatmul.f32.gmra.mxu0 %v5018
  %v7129 = vpop.f32.mrf.mxu0
  %v7130 = vadd.f32 0.0, %v7129
  %7131 = vmatmul.f32.gmra.mxu0 %v5019
  %v7132 = vpop.f32.mrf.mxu0
  %v7133 = vadd.f32 0.0, %v7132
  %7134 = vmatmul.f32.gmra.mxu0 %v5020
  %v7135 = vpop.f32.mrf.mxu0
  %v7136 = vadd.f32 0.0, %v7135
  %7137 = vmatmul.f32.gmra.mxu0 %v5025
  %v7138 = vpop.f32.mrf.mxu0
  %v7139 = vadd.f32 0.0, %v7138
  %7140 = vmatmul.f32.gmra.mxu0 %v5026
  %v7141 = vpop.f32.mrf.mxu0
  %v7142 = vadd.f32 0.0, %v7141
  %7143 = vmatmul.f32.gmra.mxu0 %v5027
  %v7144 = vpop.f32.mrf.mxu0
  %v7145 = vadd.f32 0.0, %v7144
  %7146 = vmatmul.f32.gmra.mxu0 %v5028
  %v7147 = vpop.f32.mrf.mxu0
  %v7148 = vadd.f32 0.0, %v7147
  %7149 = vmatmul.f32.gmra.mxu0 %v5029
  %v7150 = vpop.f32.mrf.mxu0
  %v7151 = vadd.f32 0.0, %v7150
  %7152 = vmatmul.f32.gmra.mxu0 %v5030
  %v7153 = vpop.f32.mrf.mxu0
  %v7154 = vadd.f32 0.0, %v7153
  %7155 = vmatmul.f32.gmra.mxu0 %v5031
  %v7156 = vpop.f32.mrf.mxu0
  %v7157 = vadd.f32 0.0, %v7156
  %7158 = vmatmul.f32.gmra.mxu0 %v5032
  %v7159 = vpop.f32.mrf.mxu0
  %v7160 = vadd.f32 0.0, %v7159
  %7161 = vmatmul.f32.gmra.mxu0 %v5037
  %v7162 = vpop.f32.mrf.mxu0
  %v7163 = vadd.f32 0.0, %v7162
  %7164 = vmatmul.f32.gmra.mxu0 %v5038
  %v7165 = vpop.f32.mrf.mxu0
  %v7166 = vadd.f32 0.0, %v7165
  %7167 = vmatmul.f32.gmra.mxu0 %v5039
  %v7168 = vpop.f32.mrf.mxu0
  %v7169 = vadd.f32 0.0, %v7168
  %7170 = vmatmul.f32.gmra.mxu0 %v5040
  %v7171 = vpop.f32.mrf.mxu0
  %v7172 = vadd.f32 0.0, %v7171
  %7173 = vmatmul.f32.gmra.mxu0 %v5041
  %v7174 = vpop.f32.mrf.mxu0
  %v7175 = vadd.f32 0.0, %v7174
  %7176 = vmatmul.f32.gmra.mxu0 %v5042
  %v7177 = vpop.f32.mrf.mxu0
  %v7178 = vadd.f32 0.0, %v7177
  %7179 = vmatmul.f32.gmra.mxu0 %v5043
  %v7180 = vpop.f32.mrf.mxu0
  %v7181 = vadd.f32 0.0, %v7180
  %7182 = vmatmul.f32.gmra.mxu0 %v5044
  %v7183 = vpop.f32.mrf.mxu0
  %v7184 = vadd.f32 0.0, %v7183
  %7185 = vmatmul.f32.gmra.mxu0 %v5049
  %v7186 = vpop.f32.mrf.mxu0
  %v7187 = vadd.f32 0.0, %v7186
  %7188 = vmatmul.f32.gmra.mxu0 %v5050
  %v7189 = vpop.f32.mrf.mxu0
  %v7190 = vadd.f32 0.0, %v7189
  %7191 = vmatmul.f32.gmra.mxu0 %v5051
  %v7192 = vpop.f32.mrf.mxu0
  %v7193 = vadd.f32 0.0, %v7192
  %7194 = vmatmul.f32.gmra.mxu0 %v5052
  %v7195 = vpop.f32.mrf.mxu0
  %v7196 = vadd.f32 0.0, %v7195
  %7197 = vmatmul.f32.gmra.mxu0 %v5053
  %v7198 = vpop.f32.mrf.mxu0
  %v7199 = vadd.f32 0.0, %v7198
  %7200 = vmatmul.f32.gmra.mxu0 %v5054
  %v7201 = vpop.f32.mrf.mxu0
  %v7202 = vadd.f32 0.0, %v7201
  %7203 = vmatmul.f32.gmra.mxu0 %v5055
  %v7204 = vpop.f32.mrf.mxu0
  %v7205 = vadd.f32 0.0, %v7204
  %7206 = vmatmul.f32.gmra.mxu0 %v5056
  %v7207 = vpop.f32.mrf.mxu0
  %v7208 = vadd.f32 0.0, %v7207
  %7209 = vmatmul.f32.gmra.mxu0 %v5061
  %v7210 = vpop.f32.mrf.mxu0
  %v7211 = vadd.f32 0.0, %v7210
  %7212 = vmatmul.f32.gmra.mxu0 %v5062
  %v7213 = vpop.f32.mrf.mxu0
  %v7214 = vadd.f32 0.0, %v7213
  %7215 = vmatmul.f32.gmra.mxu0 %v5063
  %v7216 = vpop.f32.mrf.mxu0
  %v7217 = vadd.f32 0.0, %v7216
  %7218 = vmatmul.f32.gmra.mxu0 %v5064
  %v7219 = vpop.f32.mrf.mxu0
  %v7220 = vadd.f32 0.0, %v7219
  %7221 = vmatmul.f32.gmra.mxu0 %v5065
  %v7222 = vpop.f32.mrf.mxu0
  %v7223 = vadd.f32 0.0, %v7222
  %7224 = vmatmul.f32.gmra.mxu0 %v5066
  %v7225 = vpop.f32.mrf.mxu0
  %v7226 = vadd.f32 0.0, %v7225
  %7227 = vmatmul.f32.gmra.mxu0 %v5067
  %v7228 = vpop.f32.mrf.mxu0
  %v7229 = vadd.f32 0.0, %v7228
  %7230 = vmatmul.f32.gmra.mxu0 %v5068
  %v7231 = vpop.f32.mrf.mxu0
  %v7232 = vadd.f32 0.0, %v7231
  %7233 = vdwg.mxu0
  %v7234 = vadd.f32 %v6944, %v7043
  %v7235 = vadd.f32 %v6945, %v7046
  %v7236 = vadd.f32 %v6946, %v7049
  %v7237 = vadd.f32 %v6947, %v7052
  %v7238 = vadd.f32 %v6948, %v7055
  %v7239 = vadd.f32 %v6949, %v7058
  %v7240 = vadd.f32 %v6950, %v7061
  %v7241 = vadd.f32 %v6951, %v7064
  %v7242 = vadd.f32 %v6952, %v7067
  %v7243 = vadd.f32 %v6953, %v7070
  %v7244 = vadd.f32 %v6954, %v7073
  %v7245 = vadd.f32 %v6955, %v7076
  %v7246 = vadd.f32 %v6956, %v7079
  %v7247 = vadd.f32 %v6957, %v7082
  %v7248 = vadd.f32 %v6958, %v7085
  %v7249 = vadd.f32 %v6959, %v7088
  %v7250 = vadd.f32 %v6960, %v7091
  %v7251 = vadd.f32 %v6961, %v7094
  %v7252 = vadd.f32 %v6962, %v7097
  %v7253 = vadd.f32 %v6963, %v7100
  %v7254 = vadd.f32 %v6964, %v7103
  %v7255 = vadd.f32 %v6965, %v7106
  %v7256 = vadd.f32 %v6966, %v7109
  %v7257 = vadd.f32 %v6967, %v7112
  %v7258 = vadd.f32 %v6968, %v7115
  %v7259 = vadd.f32 %v6969, %v7118
  %v7260 = vadd.f32 %v6970, %v7121
  %v7261 = vadd.f32 %v6971, %v7124
  %v7262 = vadd.f32 %v6972, %v7127
  %v7263 = vadd.f32 %v6973, %v7130
  %v7264 = vadd.f32 %v6974, %v7133
  %v7265 = vadd.f32 %v6975, %v7136
  %v7266 = vadd.f32 %v6976, %v7139
  %v7267 = vadd.f32 %v6977, %v7142
  %v7268 = vadd.f32 %v6978, %v7145
  %v7269 = vadd.f32 %v6979, %v7148
  %v7270 = vadd.f32 %v6980, %v7151
  %v7271 = vadd.f32 %v6981, %v7154
  %v7272 = vadd.f32 %v6982, %v7157
  %v7273 = vadd.f32 %v6983, %v7160
  %v7274 = vadd.f32 %v6984, %v7163
  %v7275 = vadd.f32 %v6985, %v7166
  %v7276 = vadd.f32 %v6986, %v7169
  %v7277 = vadd.f32 %v6987, %v7172
  %v7278 = vadd.f32 %v6988, %v7175
  %v7279 = vadd.f32 %v6989, %v7178
  %v7280 = vadd.f32 %v6990, %v7181
  %v7281 = vadd.f32 %v6991, %v7184
  %v7282 = vadd.f32 %v6992, %v7187
  %v7283 = vadd.f32 %v6993, %v7190
  %v7284 = vadd.f32 %v6994, %v7193
  %v7285 = vadd.f32 %v6995, %v7196
  %v7286 = vadd.f32 %v6996, %v7199
  %v7287 = vadd.f32 %v6997, %v7202
  %v7288 = vadd.f32 %v6998, %v7205
  %v7289 = vadd.f32 %v6999, %v7208
  %v7290 = vadd.f32 %v7000, %v7211
  %v7291 = vadd.f32 %v7001, %v7214
  %v7292 = vadd.f32 %v7002, %v7217
  %v7293 = vadd.f32 %v7003, %v7220
  %v7294 = vadd.f32 %v7004, %v7223
  %v7295 = vadd.f32 %v7005, %v7226
  %v7296 = vadd.f32 %v7006, %v7229
  %v7297 = vadd.f32 %v7007, %v7232
  %s7298 = scalar_lea.vmem %s4, 1024
  %v7299 = vld [vmem:[%s7298] sm:$0xff]
  %v7300 = vld [vmem:[%s7298 + $0x8] sm:$0xff]
  %v7301 = vld [vmem:[%s7298 + $0x10] sm:$0xff]
  %v7302 = vld [vmem:[%s7298 + $0x18] sm:$0xff]
  %v7303 = vld [vmem:[%s7298 + $0x20] sm:$0xff]
  %v7304 = vld [vmem:[%s7298 + $0x28] sm:$0xff]
  %v7305 = vld [vmem:[%s7298 + $0x30] sm:$0xff]
  %v7306 = vld [vmem:[%s7298 + $0x38] sm:$0xff]
  %v7307 = vld [vmem:[%s7298 + $0x40] sm:$0xff]
  %v7308 = vld [vmem:[%s7298 + $0x48] sm:$0xff]
  %v7309 = vld [vmem:[%s7298 + $0x50] sm:$0xff]
  %v7310 = vld [vmem:[%s7298 + $0x58] sm:$0xff]
  %v7311 = vld [vmem:[%s7298 + $0x60] sm:$0xff]
  %v7312 = vld [vmem:[%s7298 + $0x68] sm:$0xff]
  %v7313 = vld [vmem:[%s7298 + $0x70] sm:$0xff]
  %v7314 = vld [vmem:[%s7298 + $0x78] sm:$0xff]
  %7315 = vmatpush.msra.mxu0 %v7314
  %7316 = vmatpush.msra.mxu0 %v7313
  %7317 = vmatpush.msra.mxu0 %v7312
  %7318 = vmatpush.msra.mxu0 %v7311
  %7319 = vmatpush.msra.mxu0 %v7310
  %7320 = vmatpush.msra.mxu0 %v7309
  %7321 = vmatpush.msra.mxu0 %v7308
  %7322 = vmatpush.msra.mxu0 %v7307
  %7323 = vmatpush.msra.mxu0 %v7306
  %7324 = vmatpush.msra.mxu0 %v7305
  %7325 = vmatpush.msra.mxu0 %v7304
  %7326 = vmatpush.msra.mxu0 %v7303
  %7327 = vmatpush.msra.mxu0 %v7302
  %7328 = vmatpush.msra.mxu0 %v7301
  %7329 = vmatpush.msra.mxu0 %v7300
  %7330 = vmatpush.msra.mxu0 %v7299
  %7331 = vmatmul.f32.gmra.mxu0 %v4978
  %v7332 = vpop.f32.mrf.mxu0
  %v7333 = vadd.f32 0.0, %v7332
  %7334 = vmatmul.f32.gmra.mxu0 %v4979
  %v7335 = vpop.f32.mrf.mxu0
  %v7336 = vadd.f32 0.0, %v7335
  %7337 = vmatmul.f32.gmra.mxu0 %v4980
  %v7338 = vpop.f32.mrf.mxu0
  %v7339 = vadd.f32 0.0, %v7338
  %7340 = vmatmul.f32.gmra.mxu0 %v4981
  %v7341 = vpop.f32.mrf.mxu0
  %v7342 = vadd.f32 0.0, %v7341
  %7343 = vmatmul.f32.gmra.mxu0 %v4982
  %v7344 = vpop.f32.mrf.mxu0
  %v7345 = vadd.f32 0.0, %v7344
  %7346 = vmatmul.f32.gmra.mxu0 %v4983
  %v7347 = vpop.f32.mrf.mxu0
  %v7348 = vadd.f32 0.0, %v7347
  %7349 = vmatmul.f32.gmra.mxu0 %v4984
  %v7350 = vpop.f32.mrf.mxu0
  %v7351 = vadd.f32 0.0, %v7350
  %7352 = vmatmul.f32.gmra.mxu0 %v4985
  %v7353 = vpop.f32.mrf.mxu0
  %v7354 = vadd.f32 0.0, %v7353
  %7355 = vmatmul.f32.gmra.mxu0 %v4990
  %v7356 = vpop.f32.mrf.mxu0
  %v7357 = vadd.f32 0.0, %v7356
  %7358 = vmatmul.f32.gmra.mxu0 %v4991
  %v7359 = vpop.f32.mrf.mxu0
  %v7360 = vadd.f32 0.0, %v7359
  %7361 = vmatmul.f32.gmra.mxu0 %v4992
  %v7362 = vpop.f32.mrf.mxu0
  %v7363 = vadd.f32 0.0, %v7362
  %7364 = vmatmul.f32.gmra.mxu0 %v4993
  %v7365 = vpop.f32.mrf.mxu0
  %v7366 = vadd.f32 0.0, %v7365
  %7367 = vmatmul.f32.gmra.mxu0 %v4994
  %v7368 = vpop.f32.mrf.mxu0
  %v7369 = vadd.f32 0.0, %v7368
  %7370 = vmatmul.f32.gmra.mxu0 %v4995
  %v7371 = vpop.f32.mrf.mxu0
  %v7372 = vadd.f32 0.0, %v7371
  %7373 = vmatmul.f32.gmra.mxu0 %v4996
  %v7374 = vpop.f32.mrf.mxu0
  %v7375 = vadd.f32 0.0, %v7374
  %7376 = vmatmul.f32.gmra.mxu0 %v4997
  %v7377 = vpop.f32.mrf.mxu0
  %v7378 = vadd.f32 0.0, %v7377
  %7379 = vmatmul.f32.gmra.mxu0 %v5002
  %v7380 = vpop.f32.mrf.mxu0
  %v7381 = vadd.f32 0.0, %v7380
  %7382 = vmatmul.f32.gmra.mxu0 %v5003
  %v7383 = vpop.f32.mrf.mxu0
  %v7384 = vadd.f32 0.0, %v7383
  %7385 = vmatmul.f32.gmra.mxu0 %v5004
  %v7386 = vpop.f32.mrf.mxu0
  %v7387 = vadd.f32 0.0, %v7386
  %7388 = vmatmul.f32.gmra.mxu0 %v5005
  %v7389 = vpop.f32.mrf.mxu0
  %v7390 = vadd.f32 0.0, %v7389
  %7391 = vmatmul.f32.gmra.mxu0 %v5006
  %v7392 = vpop.f32.mrf.mxu0
  %v7393 = vadd.f32 0.0, %v7392
  %7394 = vmatmul.f32.gmra.mxu0 %v5007
  %v7395 = vpop.f32.mrf.mxu0
  %v7396 = vadd.f32 0.0, %v7395
  %7397 = vmatmul.f32.gmra.mxu0 %v5008
  %v7398 = vpop.f32.mrf.mxu0
  %v7399 = vadd.f32 0.0, %v7398
  %7400 = vmatmul.f32.gmra.mxu0 %v5009
  %v7401 = vpop.f32.mrf.mxu0
  %v7402 = vadd.f32 0.0, %v7401
  %7403 = vmatmul.f32.gmra.mxu0 %v5014
  %v7404 = vpop.f32.mrf.mxu0
  %v7405 = vadd.f32 0.0, %v7404
  %7406 = vmatmul.f32.gmra.mxu0 %v5015
  %v7407 = vpop.f32.mrf.mxu0
  %v7408 = vadd.f32 0.0, %v7407
  %7409 = vmatmul.f32.gmra.mxu0 %v5016
  %v7410 = vpop.f32.mrf.mxu0
  %v7411 = vadd.f32 0.0, %v7410
  %7412 = vmatmul.f32.gmra.mxu0 %v5017
  %v7413 = vpop.f32.mrf.mxu0
  %v7414 = vadd.f32 0.0, %v7413
  %7415 = vmatmul.f32.gmra.mxu0 %v5018
  %v7416 = vpop.f32.mrf.mxu0
  %v7417 = vadd.f32 0.0, %v7416
  %7418 = vmatmul.f32.gmra.mxu0 %v5019
  %v7419 = vpop.f32.mrf.mxu0
  %v7420 = vadd.f32 0.0, %v7419
  %7421 = vmatmul.f32.gmra.mxu0 %v5020
  %v7422 = vpop.f32.mrf.mxu0
  %v7423 = vadd.f32 0.0, %v7422
  %7424 = vmatmul.f32.gmra.mxu0 %v5021
  %v7425 = vpop.f32.mrf.mxu0
  %v7426 = vadd.f32 0.0, %v7425
  %7427 = vmatmul.f32.gmra.mxu0 %v5026
  %v7428 = vpop.f32.mrf.mxu0
  %v7429 = vadd.f32 0.0, %v7428
  %7430 = vmatmul.f32.gmra.mxu0 %v5027
  %v7431 = vpop.f32.mrf.mxu0
  %v7432 = vadd.f32 0.0, %v7431
  %7433 = vmatmul.f32.gmra.mxu0 %v5028
  %v7434 = vpop.f32.mrf.mxu0
  %v7435 = vadd.f32 0.0, %v7434
  %7436 = vmatmul.f32.gmra.mxu0 %v5029
  %v7437 = vpop.f32.mrf.mxu0
  %v7438 = vadd.f32 0.0, %v7437
  %7439 = vmatmul.f32.gmra.mxu0 %v5030
  %v7440 = vpop.f32.mrf.mxu0
  %v7441 = vadd.f32 0.0, %v7440
  %7442 = vmatmul.f32.gmra.mxu0 %v5031
  %v7443 = vpop.f32.mrf.mxu0
  %v7444 = vadd.f32 0.0, %v7443
  %7445 = vmatmul.f32.gmra.mxu0 %v5032
  %v7446 = vpop.f32.mrf.mxu0
  %v7447 = vadd.f32 0.0, %v7446
  %7448 = vmatmul.f32.gmra.mxu0 %v5033
  %v7449 = vpop.f32.mrf.mxu0
  %v7450 = vadd.f32 0.0, %v7449
  %7451 = vmatmul.f32.gmra.mxu0 %v5038
  %v7452 = vpop.f32.mrf.mxu0
  %v7453 = vadd.f32 0.0, %v7452
  %7454 = vmatmul.f32.gmra.mxu0 %v5039
  %v7455 = vpop.f32.mrf.mxu0
  %v7456 = vadd.f32 0.0, %v7455
  %7457 = vmatmul.f32.gmra.mxu0 %v5040
  %v7458 = vpop.f32.mrf.mxu0
  %v7459 = vadd.f32 0.0, %v7458
  %7460 = vmatmul.f32.gmra.mxu0 %v5041
  %v7461 = vpop.f32.mrf.mxu0
  %v7462 = vadd.f32 0.0, %v7461
  %7463 = vmatmul.f32.gmra.mxu0 %v5042
  %v7464 = vpop.f32.mrf.mxu0
  %v7465 = vadd.f32 0.0, %v7464
  %7466 = vmatmul.f32.gmra.mxu0 %v5043
  %v7467 = vpop.f32.mrf.mxu0
  %v7468 = vadd.f32 0.0, %v7467
  %7469 = vmatmul.f32.gmra.mxu0 %v5044
  %v7470 = vpop.f32.mrf.mxu0
  %v7471 = vadd.f32 0.0, %v7470
  %7472 = vmatmul.f32.gmra.mxu0 %v5045
  %v7473 = vpop.f32.mrf.mxu0
  %v7474 = vadd.f32 0.0, %v7473
  %7475 = vmatmul.f32.gmra.mxu0 %v5050
  %v7476 = vpop.f32.mrf.mxu0
  %v7477 = vadd.f32 0.0, %v7476
  %7478 = vmatmul.f32.gmra.mxu0 %v5051
  %v7479 = vpop.f32.mrf.mxu0
  %v7480 = vadd.f32 0.0, %v7479
  %7481 = vmatmul.f32.gmra.mxu0 %v5052
  %v7482 = vpop.f32.mrf.mxu0
  %v7483 = vadd.f32 0.0, %v7482
  %7484 = vmatmul.f32.gmra.mxu0 %v5053
  %v7485 = vpop.f32.mrf.mxu0
  %v7486 = vadd.f32 0.0, %v7485
  %7487 = vmatmul.f32.gmra.mxu0 %v5054
  %v7488 = vpop.f32.mrf.mxu0
  %v7489 = vadd.f32 0.0, %v7488
  %7490 = vmatmul.f32.gmra.mxu0 %v5055
  %v7491 = vpop.f32.mrf.mxu0
  %v7492 = vadd.f32 0.0, %v7491
  %7493 = vmatmul.f32.gmra.mxu0 %v5056
  %v7494 = vpop.f32.mrf.mxu0
  %v7495 = vadd.f32 0.0, %v7494
  %7496 = vmatmul.f32.gmra.mxu0 %v5057
  %v7497 = vpop.f32.mrf.mxu0
  %v7498 = vadd.f32 0.0, %v7497
  %7499 = vmatmul.f32.gmra.mxu0 %v5062
  %v7500 = vpop.f32.mrf.mxu0
  %v7501 = vadd.f32 0.0, %v7500
  %7502 = vmatmul.f32.gmra.mxu0 %v5063
  %v7503 = vpop.f32.mrf.mxu0
  %v7504 = vadd.f32 0.0, %v7503
  %7505 = vmatmul.f32.gmra.mxu0 %v5064
  %v7506 = vpop.f32.mrf.mxu0
  %v7507 = vadd.f32 0.0, %v7506
  %7508 = vmatmul.f32.gmra.mxu0 %v5065
  %v7509 = vpop.f32.mrf.mxu0
  %v7510 = vadd.f32 0.0, %v7509
  %7511 = vmatmul.f32.gmra.mxu0 %v5066
  %v7512 = vpop.f32.mrf.mxu0
  %v7513 = vadd.f32 0.0, %v7512
  %7514 = vmatmul.f32.gmra.mxu0 %v5067
  %v7515 = vpop.f32.mrf.mxu0
  %v7516 = vadd.f32 0.0, %v7515
  %7517 = vmatmul.f32.gmra.mxu0 %v5068
  %v7518 = vpop.f32.mrf.mxu0
  %v7519 = vadd.f32 0.0, %v7518
  %7520 = vmatmul.f32.gmra.mxu0 %v5069
  %v7521 = vpop.f32.mrf.mxu0
  %v7522 = vadd.f32 0.0, %v7521
  %7523 = vdwg.mxu0
  %v7524 = vadd.f32 %v7234, %v7333
  %v7525 = vadd.f32 %v7235, %v7336
  %v7526 = vadd.f32 %v7236, %v7339
  %v7527 = vadd.f32 %v7237, %v7342
  %v7528 = vadd.f32 %v7238, %v7345
  %v7529 = vadd.f32 %v7239, %v7348
  %v7530 = vadd.f32 %v7240, %v7351
  %v7531 = vadd.f32 %v7241, %v7354
  %v7532 = vadd.f32 %v7242, %v7357
  %v7533 = vadd.f32 %v7243, %v7360
  %v7534 = vadd.f32 %v7244, %v7363
  %v7535 = vadd.f32 %v7245, %v7366
  %v7536 = vadd.f32 %v7246, %v7369
  %v7537 = vadd.f32 %v7247, %v7372
  %v7538 = vadd.f32 %v7248, %v7375
  %v7539 = vadd.f32 %v7249, %v7378
  %v7540 = vadd.f32 %v7250, %v7381
  %v7541 = vadd.f32 %v7251, %v7384
  %v7542 = vadd.f32 %v7252, %v7387
  %v7543 = vadd.f32 %v7253, %v7390
  %v7544 = vadd.f32 %v7254, %v7393
  %v7545 = vadd.f32 %v7255, %v7396
  %v7546 = vadd.f32 %v7256, %v7399
  %v7547 = vadd.f32 %v7257, %v7402
  %v7548 = vadd.f32 %v7258, %v7405
  %v7549 = vadd.f32 %v7259, %v7408
  %v7550 = vadd.f32 %v7260, %v7411
  %v7551 = vadd.f32 %v7261, %v7414
  %v7552 = vadd.f32 %v7262, %v7417
  %v7553 = vadd.f32 %v7263, %v7420
  %v7554 = vadd.f32 %v7264, %v7423
  %v7555 = vadd.f32 %v7265, %v7426
  %v7556 = vadd.f32 %v7266, %v7429
  %v7557 = vadd.f32 %v7267, %v7432
  %v7558 = vadd.f32 %v7268, %v7435
  %v7559 = vadd.f32 %v7269, %v7438
  %v7560 = vadd.f32 %v7270, %v7441
  %v7561 = vadd.f32 %v7271, %v7444
  %v7562 = vadd.f32 %v7272, %v7447
  %v7563 = vadd.f32 %v7273, %v7450
  %v7564 = vadd.f32 %v7274, %v7453
  %v7565 = vadd.f32 %v7275, %v7456
  %v7566 = vadd.f32 %v7276, %v7459
  %v7567 = vadd.f32 %v7277, %v7462
  %v7568 = vadd.f32 %v7278, %v7465
  %v7569 = vadd.f32 %v7279, %v7468
  %v7570 = vadd.f32 %v7280, %v7471
  %v7571 = vadd.f32 %v7281, %v7474
  %v7572 = vadd.f32 %v7282, %v7477
  %v7573 = vadd.f32 %v7283, %v7480
  %v7574 = vadd.f32 %v7284, %v7483
  %v7575 = vadd.f32 %v7285, %v7486
  %v7576 = vadd.f32 %v7286, %v7489
  %v7577 = vadd.f32 %v7287, %v7492
  %v7578 = vadd.f32 %v7288, %v7495
  %v7579 = vadd.f32 %v7289, %v7498
  %v7580 = vadd.f32 %v7290, %v7501
  %v7581 = vadd.f32 %v7291, %v7504
  %v7582 = vadd.f32 %v7292, %v7507
  %v7583 = vadd.f32 %v7293, %v7510
  %v7584 = vadd.f32 %v7294, %v7513
  %v7585 = vadd.f32 %v7295, %v7516
  %v7586 = vadd.f32 %v7296, %v7519
  %v7587 = vadd.f32 %v7297, %v7522
  %s7588 = scalar_lea.vmem %s4, 1152
  %v7589 = vld [vmem:[%s7588] sm:$0xff]
  %v7590 = vld [vmem:[%s7588 + $0x8] sm:$0xff]
  %v7591 = vld [vmem:[%s7588 + $0x10] sm:$0xff]
  %v7592 = vld [vmem:[%s7588 + $0x18] sm:$0xff]
  %v7593 = vld [vmem:[%s7588 + $0x20] sm:$0xff]
  %v7594 = vld [vmem:[%s7588 + $0x28] sm:$0xff]
  %v7595 = vld [vmem:[%s7588 + $0x30] sm:$0xff]
  %v7596 = vld [vmem:[%s7588 + $0x38] sm:$0xff]
  %v7597 = vld [vmem:[%s7588 + $0x40] sm:$0xff]
  %v7598 = vld [vmem:[%s7588 + $0x48] sm:$0xff]
  %v7599 = vld [vmem:[%s7588 + $0x50] sm:$0xff]
  %v7600 = vld [vmem:[%s7588 + $0x58] sm:$0xff]
  %v7601 = vld [vmem:[%s7588 + $0x60] sm:$0xff]
  %v7602 = vld [vmem:[%s7588 + $0x68] sm:$0xff]
  %v7603 = vld [vmem:[%s7588 + $0x70] sm:$0xff]
  %v7604 = vld [vmem:[%s7588 + $0x78] sm:$0xff]
  %7605 = vmatpush.msra.mxu0 %v7604
  %7606 = vmatpush.msra.mxu0 %v7603
  %7607 = vmatpush.msra.mxu0 %v7602
  %7608 = vmatpush.msra.mxu0 %v7601
  %7609 = vmatpush.msra.mxu0 %v7600
  %7610 = vmatpush.msra.mxu0 %v7599
  %7611 = vmatpush.msra.mxu0 %v7598
  %7612 = vmatpush.msra.mxu0 %v7597
  %7613 = vmatpush.msra.mxu0 %v7596
  %7614 = vmatpush.msra.mxu0 %v7595
  %7615 = vmatpush.msra.mxu0 %v7594
  %7616 = vmatpush.msra.mxu0 %v7593
  %7617 = vmatpush.msra.mxu0 %v7592
  %7618 = vmatpush.msra.mxu0 %v7591
  %7619 = vmatpush.msra.mxu0 %v7590
  %7620 = vmatpush.msra.mxu0 %v7589
  %7621 = vmatmul.f32.gmra.mxu0 %v4979
  %v7622 = vpop.f32.mrf.mxu0
  %v7623 = vadd.f32 0.0, %v7622
  %7624 = vmatmul.f32.gmra.mxu0 %v4980
  %v7625 = vpop.f32.mrf.mxu0
  %v7626 = vadd.f32 0.0, %v7625
  %7627 = vmatmul.f32.gmra.mxu0 %v4981
  %v7628 = vpop.f32.mrf.mxu0
  %v7629 = vadd.f32 0.0, %v7628
  %7630 = vmatmul.f32.gmra.mxu0 %v4982
  %v7631 = vpop.f32.mrf.mxu0
  %v7632 = vadd.f32 0.0, %v7631
  %7633 = vmatmul.f32.gmra.mxu0 %v4983
  %v7634 = vpop.f32.mrf.mxu0
  %v7635 = vadd.f32 0.0, %v7634
  %7636 = vmatmul.f32.gmra.mxu0 %v4984
  %v7637 = vpop.f32.mrf.mxu0
  %v7638 = vadd.f32 0.0, %v7637
  %7639 = vmatmul.f32.gmra.mxu0 %v4985
  %v7640 = vpop.f32.mrf.mxu0
  %v7641 = vadd.f32 0.0, %v7640
  %7642 = vmatmul.f32.gmra.mxu0 %v4986
  %v7643 = vpop.f32.mrf.mxu0
  %v7644 = vadd.f32 0.0, %v7643
  %7645 = vmatmul.f32.gmra.mxu0 %v4991
  %v7646 = vpop.f32.mrf.mxu0
  %v7647 = vadd.f32 0.0, %v7646
  %7648 = vmatmul.f32.gmra.mxu0 %v4992
  %v7649 = vpop.f32.mrf.mxu0
  %v7650 = vadd.f32 0.0, %v7649
  %7651 = vmatmul.f32.gmra.mxu0 %v4993
  %v7652 = vpop.f32.mrf.mxu0
  %v7653 = vadd.f32 0.0, %v7652
  %7654 = vmatmul.f32.gmra.mxu0 %v4994
  %v7655 = vpop.f32.mrf.mxu0
  %v7656 = vadd.f32 0.0, %v7655
  %7657 = vmatmul.f32.gmra.mxu0 %v4995
  %v7658 = vpop.f32.mrf.mxu0
  %v7659 = vadd.f32 0.0, %v7658
  %7660 = vmatmul.f32.gmra.mxu0 %v4996
  %v7661 = vpop.f32.mrf.mxu0
  %v7662 = vadd.f32 0.0, %v7661
  %7663 = vmatmul.f32.gmra.mxu0 %v4997
  %v7664 = vpop.f32.mrf.mxu0
  %v7665 = vadd.f32 0.0, %v7664
  %7666 = vmatmul.f32.gmra.mxu0 %v4998
  %v7667 = vpop.f32.mrf.mxu0
  %v7668 = vadd.f32 0.0, %v7667
  %7669 = vmatmul.f32.gmra.mxu0 %v5003
  %v7670 = vpop.f32.mrf.mxu0
  %v7671 = vadd.f32 0.0, %v7670
  %7672 = vmatmul.f32.gmra.mxu0 %v5004
  %v7673 = vpop.f32.mrf.mxu0
  %v7674 = vadd.f32 0.0, %v7673
  %7675 = vmatmul.f32.gmra.mxu0 %v5005
  %v7676 = vpop.f32.mrf.mxu0
  %v7677 = vadd.f32 0.0, %v7676
  %7678 = vmatmul.f32.gmra.mxu0 %v5006
  %v7679 = vpop.f32.mrf.mxu0
  %v7680 = vadd.f32 0.0, %v7679
  %7681 = vmatmul.f32.gmra.mxu0 %v5007
  %v7682 = vpop.f32.mrf.mxu0
  %v7683 = vadd.f32 0.0, %v7682
  %7684 = vmatmul.f32.gmra.mxu0 %v5008
  %v7685 = vpop.f32.mrf.mxu0
  %v7686 = vadd.f32 0.0, %v7685
  %7687 = vmatmul.f32.gmra.mxu0 %v5009
  %v7688 = vpop.f32.mrf.mxu0
  %v7689 = vadd.f32 0.0, %v7688
  %7690 = vmatmul.f32.gmra.mxu0 %v5010
  %v7691 = vpop.f32.mrf.mxu0
  %v7692 = vadd.f32 0.0, %v7691
  %7693 = vmatmul.f32.gmra.mxu0 %v5015
  %v7694 = vpop.f32.mrf.mxu0
  %v7695 = vadd.f32 0.0, %v7694
  %7696 = vmatmul.f32.gmra.mxu0 %v5016
  %v7697 = vpop.f32.mrf.mxu0
  %v7698 = vadd.f32 0.0, %v7697
  %7699 = vmatmul.f32.gmra.mxu0 %v5017
  %v7700 = vpop.f32.mrf.mxu0
  %v7701 = vadd.f32 0.0, %v7700
  %7702 = vmatmul.f32.gmra.mxu0 %v5018
  %v7703 = vpop.f32.mrf.mxu0
  %v7704 = vadd.f32 0.0, %v7703
  %7705 = vmatmul.f32.gmra.mxu0 %v5019
  %v7706 = vpop.f32.mrf.mxu0
  %v7707 = vadd.f32 0.0, %v7706
  %7708 = vmatmul.f32.gmra.mxu0 %v5020
  %v7709 = vpop.f32.mrf.mxu0
  %v7710 = vadd.f32 0.0, %v7709
  %7711 = vmatmul.f32.gmra.mxu0 %v5021
  %v7712 = vpop.f32.mrf.mxu0
  %v7713 = vadd.f32 0.0, %v7712
  %7714 = vmatmul.f32.gmra.mxu0 %v5022
  %v7715 = vpop.f32.mrf.mxu0
  %v7716 = vadd.f32 0.0, %v7715
  %7717 = vmatmul.f32.gmra.mxu0 %v5027
  %v7718 = vpop.f32.mrf.mxu0
  %v7719 = vadd.f32 0.0, %v7718
  %7720 = vmatmul.f32.gmra.mxu0 %v5028
  %v7721 = vpop.f32.mrf.mxu0
  %v7722 = vadd.f32 0.0, %v7721
  %7723 = vmatmul.f32.gmra.mxu0 %v5029
  %v7724 = vpop.f32.mrf.mxu0
  %v7725 = vadd.f32 0.0, %v7724
  %7726 = vmatmul.f32.gmra.mxu0 %v5030
  %v7727 = vpop.f32.mrf.mxu0
  %v7728 = vadd.f32 0.0, %v7727
  %7729 = vmatmul.f32.gmra.mxu0 %v5031
  %v7730 = vpop.f32.mrf.mxu0
  %v7731 = vadd.f32 0.0, %v7730
  %7732 = vmatmul.f32.gmra.mxu0 %v5032
  %v7733 = vpop.f32.mrf.mxu0
  %v7734 = vadd.f32 0.0, %v7733
  %7735 = vmatmul.f32.gmra.mxu0 %v5033
  %v7736 = vpop.f32.mrf.mxu0
  %v7737 = vadd.f32 0.0, %v7736
  %7738 = vmatmul.f32.gmra.mxu0 %v5034
  %v7739 = vpop.f32.mrf.mxu0
  %v7740 = vadd.f32 0.0, %v7739
  %7741 = vmatmul.f32.gmra.mxu0 %v5039
  %v7742 = vpop.f32.mrf.mxu0
  %v7743 = vadd.f32 0.0, %v7742
  %7744 = vmatmul.f32.gmra.mxu0 %v5040
  %v7745 = vpop.f32.mrf.mxu0
  %v7746 = vadd.f32 0.0, %v7745
  %7747 = vmatmul.f32.gmra.mxu0 %v5041
  %v7748 = vpop.f32.mrf.mxu0
  %v7749 = vadd.f32 0.0, %v7748
  %7750 = vmatmul.f32.gmra.mxu0 %v5042
  %v7751 = vpop.f32.mrf.mxu0
  %v7752 = vadd.f32 0.0, %v7751
  %7753 = vmatmul.f32.gmra.mxu0 %v5043
  %v7754 = vpop.f32.mrf.mxu0
  %v7755 = vadd.f32 0.0, %v7754
  %7756 = vmatmul.f32.gmra.mxu0 %v5044
  %v7757 = vpop.f32.mrf.mxu0
  %v7758 = vadd.f32 0.0, %v7757
  %7759 = vmatmul.f32.gmra.mxu0 %v5045
  %v7760 = vpop.f32.mrf.mxu0
  %v7761 = vadd.f32 0.0, %v7760
  %7762 = vmatmul.f32.gmra.mxu0 %v5046
  %v7763 = vpop.f32.mrf.mxu0
  %v7764 = vadd.f32 0.0, %v7763
  %7765 = vmatmul.f32.gmra.mxu0 %v5051
  %v7766 = vpop.f32.mrf.mxu0
  %v7767 = vadd.f32 0.0, %v7766
  %7768 = vmatmul.f32.gmra.mxu0 %v5052
  %v7769 = vpop.f32.mrf.mxu0
  %v7770 = vadd.f32 0.0, %v7769
  %7771 = vmatmul.f32.gmra.mxu0 %v5053
  %v7772 = vpop.f32.mrf.mxu0
  %v7773 = vadd.f32 0.0, %v7772
  %7774 = vmatmul.f32.gmra.mxu0 %v5054
  %v7775 = vpop.f32.mrf.mxu0
  %v7776 = vadd.f32 0.0, %v7775
  %7777 = vmatmul.f32.gmra.mxu0 %v5055
  %v7778 = vpop.f32.mrf.mxu0
  %v7779 = vadd.f32 0.0, %v7778
  %7780 = vmatmul.f32.gmra.mxu0 %v5056
  %v7781 = vpop.f32.mrf.mxu0
  %v7782 = vadd.f32 0.0, %v7781
  %7783 = vmatmul.f32.gmra.mxu0 %v5057
  %v7784 = vpop.f32.mrf.mxu0
  %v7785 = vadd.f32 0.0, %v7784
  %7786 = vmatmul.f32.gmra.mxu0 %v5058
  %v7787 = vpop.f32.mrf.mxu0
  %v7788 = vadd.f32 0.0, %v7787
  %7789 = vmatmul.f32.gmra.mxu0 %v5063
  %v7790 = vpop.f32.mrf.mxu0
  %v7791 = vadd.f32 0.0, %v7790
  %7792 = vmatmul.f32.gmra.mxu0 %v5064
  %v7793 = vpop.f32.mrf.mxu0
  %v7794 = vadd.f32 0.0, %v7793
  %7795 = vmatmul.f32.gmra.mxu0 %v5065
  %v7796 = vpop.f32.mrf.mxu0
  %v7797 = vadd.f32 0.0, %v7796
  %7798 = vmatmul.f32.gmra.mxu0 %v5066
  %v7799 = vpop.f32.mrf.mxu0
  %v7800 = vadd.f32 0.0, %v7799
  %7801 = vmatmul.f32.gmra.mxu0 %v5067
  %v7802 = vpop.f32.mrf.mxu0
  %v7803 = vadd.f32 0.0, %v7802
  %7804 = vmatmul.f32.gmra.mxu0 %v5068
  %v7805 = vpop.f32.mrf.mxu0
  %v7806 = vadd.f32 0.0, %v7805
  %7807 = vmatmul.f32.gmra.mxu0 %v5069
  %v7808 = vpop.f32.mrf.mxu0
  %v7809 = vadd.f32 0.0, %v7808
  %7810 = vmatmul.f32.gmra.mxu0 %v5070
  %v7811 = vpop.f32.mrf.mxu0
  %v7812 = vadd.f32 0.0, %v7811
  %7813 = vdwg.mxu0
  %v7814 = vadd.f32 %v7524, %v7623
  %v7815 = vadd.f32 %v7525, %v7626
  %v7816 = vadd.f32 %v7526, %v7629
  %v7817 = vadd.f32 %v7527, %v7632
  %v7818 = vadd.f32 %v7528, %v7635
  %v7819 = vadd.f32 %v7529, %v7638
  %v7820 = vadd.f32 %v7530, %v7641
  %v7821 = vadd.f32 %v7531, %v7644
  %v7822 = vadd.f32 %v7532, %v7647
  %v7823 = vadd.f32 %v7533, %v7650
  %v7824 = vadd.f32 %v7534, %v7653
  %v7825 = vadd.f32 %v7535, %v7656
  %v7826 = vadd.f32 %v7536, %v7659
  %v7827 = vadd.f32 %v7537, %v7662
  %v7828 = vadd.f32 %v7538, %v7665
  %v7829 = vadd.f32 %v7539, %v7668
  %v7830 = vadd.f32 %v7540, %v7671
  %v7831 = vadd.f32 %v7541, %v7674
  %v7832 = vadd.f32 %v7542, %v7677
  %v7833 = vadd.f32 %v7543, %v7680
  %v7834 = vadd.f32 %v7544, %v7683
  %v7835 = vadd.f32 %v7545, %v7686
  %v7836 = vadd.f32 %v7546, %v7689
  %v7837 = vadd.f32 %v7547, %v7692
  %v7838 = vadd.f32 %v7548, %v7695
  %v7839 = vadd.f32 %v7549, %v7698
  %v7840 = vadd.f32 %v7550, %v7701
  %v7841 = vadd.f32 %v7551, %v7704
  %v7842 = vadd.f32 %v7552, %v7707
  %v7843 = vadd.f32 %v7553, %v7710
  %v7844 = vadd.f32 %v7554, %v7713
  %v7845 = vadd.f32 %v7555, %v7716
  %v7846 = vadd.f32 %v7556, %v7719
  %v7847 = vadd.f32 %v7557, %v7722
  %v7848 = vadd.f32 %v7558, %v7725
  %v7849 = vadd.f32 %v7559, %v7728
  %v7850 = vadd.f32 %v7560, %v7731
  %v7851 = vadd.f32 %v7561, %v7734
  %v7852 = vadd.f32 %v7562, %v7737
  %v7853 = vadd.f32 %v7563, %v7740
  %v7854 = vadd.f32 %v7564, %v7743
  %v7855 = vadd.f32 %v7565, %v7746
  %v7856 = vadd.f32 %v7566, %v7749
  %v7857 = vadd.f32 %v7567, %v7752
  %v7858 = vadd.f32 %v7568, %v7755
  %v7859 = vadd.f32 %v7569, %v7758
  %v7860 = vadd.f32 %v7570, %v7761
  %v7861 = vadd.f32 %v7571, %v7764
  %v7862 = vadd.f32 %v7572, %v7767
  %v7863 = vadd.f32 %v7573, %v7770
  %v7864 = vadd.f32 %v7574, %v7773
  %v7865 = vadd.f32 %v7575, %v7776
  %v7866 = vadd.f32 %v7576, %v7779
  %v7867 = vadd.f32 %v7577, %v7782
  %v7868 = vadd.f32 %v7578, %v7785
  %v7869 = vadd.f32 %v7579, %v7788
  %v7870 = vadd.f32 %v7580, %v7791
  %v7871 = vadd.f32 %v7581, %v7794
  %v7872 = vadd.f32 %v7582, %v7797
  %v7873 = vadd.f32 %v7583, %v7800
  %v7874 = vadd.f32 %v7584, %v7803
  %v7875 = vadd.f32 %v7585, %v7806
  %v7876 = vadd.f32 %v7586, %v7809
  %v7877 = vadd.f32 %v7587, %v7812
  %s7878 = scalar_lea.vmem %s4, 1280
  %v7879 = vld [vmem:[%s7878] sm:$0xff]
  %v7880 = vld [vmem:[%s7878 + $0x8] sm:$0xff]
  %v7881 = vld [vmem:[%s7878 + $0x10] sm:$0xff]
  %v7882 = vld [vmem:[%s7878 + $0x18] sm:$0xff]
  %v7883 = vld [vmem:[%s7878 + $0x20] sm:$0xff]
  %v7884 = vld [vmem:[%s7878 + $0x28] sm:$0xff]
  %v7885 = vld [vmem:[%s7878 + $0x30] sm:$0xff]
  %v7886 = vld [vmem:[%s7878 + $0x38] sm:$0xff]
  %v7887 = vld [vmem:[%s7878 + $0x40] sm:$0xff]
  %v7888 = vld [vmem:[%s7878 + $0x48] sm:$0xff]
  %v7889 = vld [vmem:[%s7878 + $0x50] sm:$0xff]
  %v7890 = vld [vmem:[%s7878 + $0x58] sm:$0xff]
  %v7891 = vld [vmem:[%s7878 + $0x60] sm:$0xff]
  %v7892 = vld [vmem:[%s7878 + $0x68] sm:$0xff]
  %v7893 = vld [vmem:[%s7878 + $0x70] sm:$0xff]
  %v7894 = vld [vmem:[%s7878 + $0x78] sm:$0xff]
  %7895 = vmatpush.msra.mxu0 %v7894
  %7896 = vmatpush.msra.mxu0 %v7893
  %7897 = vmatpush.msra.mxu0 %v7892
  %7898 = vmatpush.msra.mxu0 %v7891
  %7899 = vmatpush.msra.mxu0 %v7890
  %7900 = vmatpush.msra.mxu0 %v7889
  %7901 = vmatpush.msra.mxu0 %v7888
  %7902 = vmatpush.msra.mxu0 %v7887
  %7903 = vmatpush.msra.mxu0 %v7886
  %7904 = vmatpush.msra.mxu0 %v7885
  %7905 = vmatpush.msra.mxu0 %v7884
  %7906 = vmatpush.msra.mxu0 %v7883
  %7907 = vmatpush.msra.mxu0 %v7882
  %7908 = vmatpush.msra.mxu0 %v7881
  %7909 = vmatpush.msra.mxu0 %v7880
  %7910 = vmatpush.msra.mxu0 %v7879
  %7911 = vmatmul.f32.gmra.mxu0 %v4987
  %v7912 = vpop.f32.mrf.mxu0
  %v7913 = vadd.f32 0.0, %v7912
  %7914 = vmatmul.f32.gmra.mxu0 %v4988
  %v7915 = vpop.f32.mrf.mxu0
  %v7916 = vadd.f32 0.0, %v7915
  %7917 = vmatmul.f32.gmra.mxu0 %v4989
  %v7918 = vpop.f32.mrf.mxu0
  %v7919 = vadd.f32 0.0, %v7918
  %7920 = vmatmul.f32.gmra.mxu0 %v4990
  %v7921 = vpop.f32.mrf.mxu0
  %v7922 = vadd.f32 0.0, %v7921
  %7923 = vmatmul.f32.gmra.mxu0 %v4991
  %v7924 = vpop.f32.mrf.mxu0
  %v7925 = vadd.f32 0.0, %v7924
  %7926 = vmatmul.f32.gmra.mxu0 %v4992
  %v7927 = vpop.f32.mrf.mxu0
  %v7928 = vadd.f32 0.0, %v7927
  %7929 = vmatmul.f32.gmra.mxu0 %v4993
  %v7930 = vpop.f32.mrf.mxu0
  %v7931 = vadd.f32 0.0, %v7930
  %7932 = vmatmul.f32.gmra.mxu0 %v4994
  %v7933 = vpop.f32.mrf.mxu0
  %v7934 = vadd.f32 0.0, %v7933
  %7935 = vmatmul.f32.gmra.mxu0 %v4999
  %v7936 = vpop.f32.mrf.mxu0
  %v7937 = vadd.f32 0.0, %v7936
  %7938 = vmatmul.f32.gmra.mxu0 %v5000
  %v7939 = vpop.f32.mrf.mxu0
  %v7940 = vadd.f32 0.0, %v7939
  %7941 = vmatmul.f32.gmra.mxu0 %v5001
  %v7942 = vpop.f32.mrf.mxu0
  %v7943 = vadd.f32 0.0, %v7942
  %7944 = vmatmul.f32.gmra.mxu0 %v5002
  %v7945 = vpop.f32.mrf.mxu0
  %v7946 = vadd.f32 0.0, %v7945
  %7947 = vmatmul.f32.gmra.mxu0 %v5003
  %v7948 = vpop.f32.mrf.mxu0
  %v7949 = vadd.f32 0.0, %v7948
  %7950 = vmatmul.f32.gmra.mxu0 %v5004
  %v7951 = vpop.f32.mrf.mxu0
  %v7952 = vadd.f32 0.0, %v7951
  %7953 = vmatmul.f32.gmra.mxu0 %v5005
  %v7954 = vpop.f32.mrf.mxu0
  %v7955 = vadd.f32 0.0, %v7954
  %7956 = vmatmul.f32.gmra.mxu0 %v5006
  %v7957 = vpop.f32.mrf.mxu0
  %v7958 = vadd.f32 0.0, %v7957
  %7959 = vmatmul.f32.gmra.mxu0 %v5011
  %v7960 = vpop.f32.mrf.mxu0
  %v7961 = vadd.f32 0.0, %v7960
  %7962 = vmatmul.f32.gmra.mxu0 %v5012
  %v7963 = vpop.f32.mrf.mxu0
  %v7964 = vadd.f32 0.0, %v7963
  %7965 = vmatmul.f32.gmra.mxu0 %v5013
  %v7966 = vpop.f32.mrf.mxu0
  %v7967 = vadd.f32 0.0, %v7966
  %7968 = vmatmul.f32.gmra.mxu0 %v5014
  %v7969 = vpop.f32.mrf.mxu0
  %v7970 = vadd.f32 0.0, %v7969
  %7971 = vmatmul.f32.gmra.mxu0 %v5015
  %v7972 = vpop.f32.mrf.mxu0
  %v7973 = vadd.f32 0.0, %v7972
  %7974 = vmatmul.f32.gmra.mxu0 %v5016
  %v7975 = vpop.f32.mrf.mxu0
  %v7976 = vadd.f32 0.0, %v7975
  %7977 = vmatmul.f32.gmra.mxu0 %v5017
  %v7978 = vpop.f32.mrf.mxu0
  %v7979 = vadd.f32 0.0, %v7978
  %7980 = vmatmul.f32.gmra.mxu0 %v5018
  %v7981 = vpop.f32.mrf.mxu0
  %v7982 = vadd.f32 0.0, %v7981
  %7983 = vmatmul.f32.gmra.mxu0 %v5023
  %v7984 = vpop.f32.mrf.mxu0
  %v7985 = vadd.f32 0.0, %v7984
  %7986 = vmatmul.f32.gmra.mxu0 %v5024
  %v7987 = vpop.f32.mrf.mxu0
  %v7988 = vadd.f32 0.0, %v7987
  %7989 = vmatmul.f32.gmra.mxu0 %v5025
  %v7990 = vpop.f32.mrf.mxu0
  %v7991 = vadd.f32 0.0, %v7990
  %7992 = vmatmul.f32.gmra.mxu0 %v5026
  %v7993 = vpop.f32.mrf.mxu0
  %v7994 = vadd.f32 0.0, %v7993
  %7995 = vmatmul.f32.gmra.mxu0 %v5027
  %v7996 = vpop.f32.mrf.mxu0
  %v7997 = vadd.f32 0.0, %v7996
  %7998 = vmatmul.f32.gmra.mxu0 %v5028
  %v7999 = vpop.f32.mrf.mxu0
  %v8000 = vadd.f32 0.0, %v7999
  %8001 = vmatmul.f32.gmra.mxu0 %v5029
  %v8002 = vpop.f32.mrf.mxu0
  %v8003 = vadd.f32 0.0, %v8002
  %8004 = vmatmul.f32.gmra.mxu0 %v5030
  %v8005 = vpop.f32.mrf.mxu0
  %v8006 = vadd.f32 0.0, %v8005
  %8007 = vmatmul.f32.gmra.mxu0 %v5035
  %v8008 = vpop.f32.mrf.mxu0
  %v8009 = vadd.f32 0.0, %v8008
  %8010 = vmatmul.f32.gmra.mxu0 %v5036
  %v8011 = vpop.f32.mrf.mxu0
  %v8012 = vadd.f32 0.0, %v8011
  %8013 = vmatmul.f32.gmra.mxu0 %v5037
  %v8014 = vpop.f32.mrf.mxu0
  %v8015 = vadd.f32 0.0, %v8014
  %8016 = vmatmul.f32.gmra.mxu0 %v5038
  %v8017 = vpop.f32.mrf.mxu0
  %v8018 = vadd.f32 0.0, %v8017
  %8019 = vmatmul.f32.gmra.mxu0 %v5039
  %v8020 = vpop.f32.mrf.mxu0
  %v8021 = vadd.f32 0.0, %v8020
  %8022 = vmatmul.f32.gmra.mxu0 %v5040
  %v8023 = vpop.f32.mrf.mxu0
  %v8024 = vadd.f32 0.0, %v8023
  %8025 = vmatmul.f32.gmra.mxu0 %v5041
  %v8026 = vpop.f32.mrf.mxu0
  %v8027 = vadd.f32 0.0, %v8026
  %8028 = vmatmul.f32.gmra.mxu0 %v5042
  %v8029 = vpop.f32.mrf.mxu0
  %v8030 = vadd.f32 0.0, %v8029
  %8031 = vmatmul.f32.gmra.mxu0 %v5047
  %v8032 = vpop.f32.mrf.mxu0
  %v8033 = vadd.f32 0.0, %v8032
  %8034 = vmatmul.f32.gmra.mxu0 %v5048
  %v8035 = vpop.f32.mrf.mxu0
  %v8036 = vadd.f32 0.0, %v8035
  %8037 = vmatmul.f32.gmra.mxu0 %v5049
  %v8038 = vpop.f32.mrf.mxu0
  %v8039 = vadd.f32 0.0, %v8038
  %8040 = vmatmul.f32.gmra.mxu0 %v5050
  %v8041 = vpop.f32.mrf.mxu0
  %v8042 = vadd.f32 0.0, %v8041
  %8043 = vmatmul.f32.gmra.mxu0 %v5051
  %v8044 = vpop.f32.mrf.mxu0
  %v8045 = vadd.f32 0.0, %v8044
  %8046 = vmatmul.f32.gmra.mxu0 %v5052
  %v8047 = vpop.f32.mrf.mxu0
  %v8048 = vadd.f32 0.0, %v8047
  %8049 = vmatmul.f32.gmra.mxu0 %v5053
  %v8050 = vpop.f32.mrf.mxu0
  %v8051 = vadd.f32 0.0, %v8050
  %8052 = vmatmul.f32.gmra.mxu0 %v5054
  %v8053 = vpop.f32.mrf.mxu0
  %v8054 = vadd.f32 0.0, %v8053
  %8055 = vmatmul.f32.gmra.mxu0 %v5059
  %v8056 = vpop.f32.mrf.mxu0
  %v8057 = vadd.f32 0.0, %v8056
  %8058 = vmatmul.f32.gmra.mxu0 %v5060
  %v8059 = vpop.f32.mrf.mxu0
  %v8060 = vadd.f32 0.0, %v8059
  %8061 = vmatmul.f32.gmra.mxu0 %v5061
  %v8062 = vpop.f32.mrf.mxu0
  %v8063 = vadd.f32 0.0, %v8062
  %8064 = vmatmul.f32.gmra.mxu0 %v5062
  %v8065 = vpop.f32.mrf.mxu0
  %v8066 = vadd.f32 0.0, %v8065
  %8067 = vmatmul.f32.gmra.mxu0 %v5063
  %v8068 = vpop.f32.mrf.mxu0
  %v8069 = vadd.f32 0.0, %v8068
  %8070 = vmatmul.f32.gmra.mxu0 %v5064
  %v8071 = vpop.f32.mrf.mxu0
  %v8072 = vadd.f32 0.0, %v8071
  %8073 = vmatmul.f32.gmra.mxu0 %v5065
  %v8074 = vpop.f32.mrf.mxu0
  %v8075 = vadd.f32 0.0, %v8074
  %8076 = vmatmul.f32.gmra.mxu0 %v5066
  %v8077 = vpop.f32.mrf.mxu0
  %v8078 = vadd.f32 0.0, %v8077
  %8079 = vmatmul.f32.gmra.mxu0 %v5071
  %v8080 = vpop.f32.mrf.mxu0
  %v8081 = vadd.f32 0.0, %v8080
  %8082 = vmatmul.f32.gmra.mxu0 %v5072
  %v8083 = vpop.f32.mrf.mxu0
  %v8084 = vadd.f32 0.0, %v8083
  %8085 = vmatmul.f32.gmra.mxu0 %v5073
  %v8086 = vpop.f32.mrf.mxu0
  %v8087 = vadd.f32 0.0, %v8086
  %8088 = vmatmul.f32.gmra.mxu0 %v5074
  %v8089 = vpop.f32.mrf.mxu0
  %v8090 = vadd.f32 0.0, %v8089
  %8091 = vmatmul.f32.gmra.mxu0 %v5075
  %v8092 = vpop.f32.mrf.mxu0
  %v8093 = vadd.f32 0.0, %v8092
  %8094 = vmatmul.f32.gmra.mxu0 %v5076
  %v8095 = vpop.f32.mrf.mxu0
  %v8096 = vadd.f32 0.0, %v8095
  %8097 = vmatmul.f32.gmra.mxu0 %v5077
  %v8098 = vpop.f32.mrf.mxu0
  %v8099 = vadd.f32 0.0, %v8098
  %8100 = vmatmul.f32.gmra.mxu0 %v5078
  %v8101 = vpop.f32.mrf.mxu0
  %v8102 = vadd.f32 0.0, %v8101
  %8103 = vdwg.mxu0
  %v8104 = vadd.f32 %v7814, %v7913
  %v8105 = vadd.f32 %v7815, %v7916
  %v8106 = vadd.f32 %v7816, %v7919
  %v8107 = vadd.f32 %v7817, %v7922
  %v8108 = vadd.f32 %v7818, %v7925
  %v8109 = vadd.f32 %v7819, %v7928
  %v8110 = vadd.f32 %v7820, %v7931
  %v8111 = vadd.f32 %v7821, %v7934
  %v8112 = vadd.f32 %v7822, %v7937
  %v8113 = vadd.f32 %v7823, %v7940
  %v8114 = vadd.f32 %v7824, %v7943
  %v8115 = vadd.f32 %v7825, %v7946
  %v8116 = vadd.f32 %v7826, %v7949
  %v8117 = vadd.f32 %v7827, %v7952
  %v8118 = vadd.f32 %v7828, %v7955
  %v8119 = vadd.f32 %v7829, %v7958
  %v8120 = vadd.f32 %v7830, %v7961
  %v8121 = vadd.f32 %v7831, %v7964
  %v8122 = vadd.f32 %v7832, %v7967
  %v8123 = vadd.f32 %v7833, %v7970
  %v8124 = vadd.f32 %v7834, %v7973
  %v8125 = vadd.f32 %v7835, %v7976
  %v8126 = vadd.f32 %v7836, %v7979
  %v8127 = vadd.f32 %v7837, %v7982
  %v8128 = vadd.f32 %v7838, %v7985
  %v8129 = vadd.f32 %v7839, %v7988
  %v8130 = vadd.f32 %v7840, %v7991
  %v8131 = vadd.f32 %v7841, %v7994
  %v8132 = vadd.f32 %v7842, %v7997
  %v8133 = vadd.f32 %v7843, %v8000
  %v8134 = vadd.f32 %v7844, %v8003
  %v8135 = vadd.f32 %v7845, %v8006
  %v8136 = vadd.f32 %v7846, %v8009
  %v8137 = vadd.f32 %v7847, %v8012
  %v8138 = vadd.f32 %v7848, %v8015
  %v8139 = vadd.f32 %v7849, %v8018
  %v8140 = vadd.f32 %v7850, %v8021
  %v8141 = vadd.f32 %v7851, %v8024
  %v8142 = vadd.f32 %v7852, %v8027
  %v8143 = vadd.f32 %v7853, %v8030
  %v8144 = vadd.f32 %v7854, %v8033
  %v8145 = vadd.f32 %v7855, %v8036
  %v8146 = vadd.f32 %v7856, %v8039
  %v8147 = vadd.f32 %v7857, %v8042
  %v8148 = vadd.f32 %v7858, %v8045
  %v8149 = vadd.f32 %v7859, %v8048
  %v8150 = vadd.f32 %v7860, %v8051
  %v8151 = vadd.f32 %v7861, %v8054
  %v8152 = vadd.f32 %v7862, %v8057
  %v8153 = vadd.f32 %v7863, %v8060
  %v8154 = vadd.f32 %v7864, %v8063
  %v8155 = vadd.f32 %v7865, %v8066
  %v8156 = vadd.f32 %v7866, %v8069
  %v8157 = vadd.f32 %v7867, %v8072
  %v8158 = vadd.f32 %v7868, %v8075
  %v8159 = vadd.f32 %v7869, %v8078
  %v8160 = vadd.f32 %v7870, %v8081
  %v8161 = vadd.f32 %v7871, %v8084
  %v8162 = vadd.f32 %v7872, %v8087
  %v8163 = vadd.f32 %v7873, %v8090
  %v8164 = vadd.f32 %v7874, %v8093
  %v8165 = vadd.f32 %v7875, %v8096
  %v8166 = vadd.f32 %v7876, %v8099
  %v8167 = vadd.f32 %v7877, %v8102
  %s8168 = scalar_lea.vmem %s4, 1408
  %v8169 = vld [vmem:[%s8168] sm:$0xff]
  %v8170 = vld [vmem:[%s8168 + $0x8] sm:$0xff]
  %v8171 = vld [vmem:[%s8168 + $0x10] sm:$0xff]
  %v8172 = vld [vmem:[%s8168 + $0x18] sm:$0xff]
  %v8173 = vld [vmem:[%s8168 + $0x20] sm:$0xff]
  %v8174 = vld [vmem:[%s8168 + $0x28] sm:$0xff]
  %v8175 = vld [vmem:[%s8168 + $0x30] sm:$0xff]
  %v8176 = vld [vmem:[%s8168 + $0x38] sm:$0xff]
  %v8177 = vld [vmem:[%s8168 + $0x40] sm:$0xff]
  %v8178 = vld [vmem:[%s8168 + $0x48] sm:$0xff]
  %v8179 = vld [vmem:[%s8168 + $0x50] sm:$0xff]
  %v8180 = vld [vmem:[%s8168 + $0x58] sm:$0xff]
  %v8181 = vld [vmem:[%s8168 + $0x60] sm:$0xff]
  %v8182 = vld [vmem:[%s8168 + $0x68] sm:$0xff]
  %v8183 = vld [vmem:[%s8168 + $0x70] sm:$0xff]
  %v8184 = vld [vmem:[%s8168 + $0x78] sm:$0xff]
  %8185 = vmatpush.msra.mxu0 %v8184
  %8186 = vmatpush.msra.mxu0 %v8183
  %8187 = vmatpush.msra.mxu0 %v8182
  %8188 = vmatpush.msra.mxu0 %v8181
  %8189 = vmatpush.msra.mxu0 %v8180
  %8190 = vmatpush.msra.mxu0 %v8179
  %8191 = vmatpush.msra.mxu0 %v8178
  %8192 = vmatpush.msra.mxu0 %v8177
  %8193 = vmatpush.msra.mxu0 %v8176
  %8194 = vmatpush.msra.mxu0 %v8175
  %8195 = vmatpush.msra.mxu0 %v8174
  %8196 = vmatpush.msra.mxu0 %v8173
  %8197 = vmatpush.msra.mxu0 %v8172
  %8198 = vmatpush.msra.mxu0 %v8171
  %8199 = vmatpush.msra.mxu0 %v8170
  %8200 = vmatpush.msra.mxu0 %v8169
  %8201 = vmatmul.f32.gmra.mxu0 %v4988
  %v8202 = vpop.f32.mrf.mxu0
  %v8203 = vadd.f32 0.0, %v8202
  %8204 = vmatmul.f32.gmra.mxu0 %v4989
  %v8205 = vpop.f32.mrf.mxu0
  %v8206 = vadd.f32 0.0, %v8205
  %8207 = vmatmul.f32.gmra.mxu0 %v4990
  %v8208 = vpop.f32.mrf.mxu0
  %v8209 = vadd.f32 0.0, %v8208
  %8210 = vmatmul.f32.gmra.mxu0 %v4991
  %v8211 = vpop.f32.mrf.mxu0
  %v8212 = vadd.f32 0.0, %v8211
  %8213 = vmatmul.f32.gmra.mxu0 %v4992
  %v8214 = vpop.f32.mrf.mxu0
  %v8215 = vadd.f32 0.0, %v8214
  %8216 = vmatmul.f32.gmra.mxu0 %v4993
  %v8217 = vpop.f32.mrf.mxu0
  %v8218 = vadd.f32 0.0, %v8217
  %8219 = vmatmul.f32.gmra.mxu0 %v4994
  %v8220 = vpop.f32.mrf.mxu0
  %v8221 = vadd.f32 0.0, %v8220
  %8222 = vmatmul.f32.gmra.mxu0 %v4995
  %v8223 = vpop.f32.mrf.mxu0
  %v8224 = vadd.f32 0.0, %v8223
  %8225 = vmatmul.f32.gmra.mxu0 %v5000
  %v8226 = vpop.f32.mrf.mxu0
  %v8227 = vadd.f32 0.0, %v8226
  %8228 = vmatmul.f32.gmra.mxu0 %v5001
  %v8229 = vpop.f32.mrf.mxu0
  %v8230 = vadd.f32 0.0, %v8229
  %8231 = vmatmul.f32.gmra.mxu0 %v5002
  %v8232 = vpop.f32.mrf.mxu0
  %v8233 = vadd.f32 0.0, %v8232
  %8234 = vmatmul.f32.gmra.mxu0 %v5003
  %v8235 = vpop.f32.mrf.mxu0
  %v8236 = vadd.f32 0.0, %v8235
  %8237 = vmatmul.f32.gmra.mxu0 %v5004
  %v8238 = vpop.f32.mrf.mxu0
  %v8239 = vadd.f32 0.0, %v8238
  %8240 = vmatmul.f32.gmra.mxu0 %v5005
  %v8241 = vpop.f32.mrf.mxu0
  %v8242 = vadd.f32 0.0, %v8241
  %8243 = vmatmul.f32.gmra.mxu0 %v5006
  %v8244 = vpop.f32.mrf.mxu0
  %v8245 = vadd.f32 0.0, %v8244
  %8246 = vmatmul.f32.gmra.mxu0 %v5007
  %v8247 = vpop.f32.mrf.mxu0
  %v8248 = vadd.f32 0.0, %v8247
  %8249 = vmatmul.f32.gmra.mxu0 %v5012
  %v8250 = vpop.f32.mrf.mxu0
  %v8251 = vadd.f32 0.0, %v8250
  %8252 = vmatmul.f32.gmra.mxu0 %v5013
  %v8253 = vpop.f32.mrf.mxu0
  %v8254 = vadd.f32 0.0, %v8253
  %8255 = vmatmul.f32.gmra.mxu0 %v5014
  %v8256 = vpop.f32.mrf.mxu0
  %v8257 = vadd.f32 0.0, %v8256
  %8258 = vmatmul.f32.gmra.mxu0 %v5015
  %v8259 = vpop.f32.mrf.mxu0
  %v8260 = vadd.f32 0.0, %v8259
  %8261 = vmatmul.f32.gmra.mxu0 %v5016
  %v8262 = vpop.f32.mrf.mxu0
  %v8263 = vadd.f32 0.0, %v8262
  %8264 = vmatmul.f32.gmra.mxu0 %v5017
  %v8265 = vpop.f32.mrf.mxu0
  %v8266 = vadd.f32 0.0, %v8265
  %8267 = vmatmul.f32.gmra.mxu0 %v5018
  %v8268 = vpop.f32.mrf.mxu0
  %v8269 = vadd.f32 0.0, %v8268
  %8270 = vmatmul.f32.gmra.mxu0 %v5019
  %v8271 = vpop.f32.mrf.mxu0
  %v8272 = vadd.f32 0.0, %v8271
  %8273 = vmatmul.f32.gmra.mxu0 %v5024
  %v8274 = vpop.f32.mrf.mxu0
  %v8275 = vadd.f32 0.0, %v8274
  %8276 = vmatmul.f32.gmra.mxu0 %v5025
  %v8277 = vpop.f32.mrf.mxu0
  %v8278 = vadd.f32 0.0, %v8277
  %8279 = vmatmul.f32.gmra.mxu0 %v5026
  %v8280 = vpop.f32.mrf.mxu0
  %v8281 = vadd.f32 0.0, %v8280
  %8282 = vmatmul.f32.gmra.mxu0 %v5027
  %v8283 = vpop.f32.mrf.mxu0
  %v8284 = vadd.f32 0.0, %v8283
  %8285 = vmatmul.f32.gmra.mxu0 %v5028
  %v8286 = vpop.f32.mrf.mxu0
  %v8287 = vadd.f32 0.0, %v8286
  %8288 = vmatmul.f32.gmra.mxu0 %v5029
  %v8289 = vpop.f32.mrf.mxu0
  %v8290 = vadd.f32 0.0, %v8289
  %8291 = vmatmul.f32.gmra.mxu0 %v5030
  %v8292 = vpop.f32.mrf.mxu0
  %v8293 = vadd.f32 0.0, %v8292
  %8294 = vmatmul.f32.gmra.mxu0 %v5031
  %v8295 = vpop.f32.mrf.mxu0
  %v8296 = vadd.f32 0.0, %v8295
  %8297 = vmatmul.f32.gmra.mxu0 %v5036
  %v8298 = vpop.f32.mrf.mxu0
  %v8299 = vadd.f32 0.0, %v8298
  %8300 = vmatmul.f32.gmra.mxu0 %v5037
  %v8301 = vpop.f32.mrf.mxu0
  %v8302 = vadd.f32 0.0, %v8301
  %8303 = vmatmul.f32.gmra.mxu0 %v5038
  %v8304 = vpop.f32.mrf.mxu0
  %v8305 = vadd.f32 0.0, %v8304
  %8306 = vmatmul.f32.gmra.mxu0 %v5039
  %v8307 = vpop.f32.mrf.mxu0
  %v8308 = vadd.f32 0.0, %v8307
  %8309 = vmatmul.f32.gmra.mxu0 %v5040
  %v8310 = vpop.f32.mrf.mxu0
  %v8311 = vadd.f32 0.0, %v8310
  %8312 = vmatmul.f32.gmra.mxu0 %v5041
  %v8313 = vpop.f32.mrf.mxu0
  %v8314 = vadd.f32 0.0, %v8313
  %8315 = vmatmul.f32.gmra.mxu0 %v5042
  %v8316 = vpop.f32.mrf.mxu0
  %v8317 = vadd.f32 0.0, %v8316
  %8318 = vmatmul.f32.gmra.mxu0 %v5043
  %v8319 = vpop.f32.mrf.mxu0
  %v8320 = vadd.f32 0.0, %v8319
  %8321 = vmatmul.f32.gmra.mxu0 %v5048
  %v8322 = vpop.f32.mrf.mxu0
  %v8323 = vadd.f32 0.0, %v8322
  %8324 = vmatmul.f32.gmra.mxu0 %v5049
  %v8325 = vpop.f32.mrf.mxu0
  %v8326 = vadd.f32 0.0, %v8325
  %8327 = vmatmul.f32.gmra.mxu0 %v5050
  %v8328 = vpop.f32.mrf.mxu0
  %v8329 = vadd.f32 0.0, %v8328
  %8330 = vmatmul.f32.gmra.mxu0 %v5051
  %v8331 = vpop.f32.mrf.mxu0
  %v8332 = vadd.f32 0.0, %v8331
  %8333 = vmatmul.f32.gmra.mxu0 %v5052
  %v8334 = vpop.f32.mrf.mxu0
  %v8335 = vadd.f32 0.0, %v8334
  %8336 = vmatmul.f32.gmra.mxu0 %v5053
  %v8337 = vpop.f32.mrf.mxu0
  %v8338 = vadd.f32 0.0, %v8337
  %8339 = vmatmul.f32.gmra.mxu0 %v5054
  %v8340 = vpop.f32.mrf.mxu0
  %v8341 = vadd.f32 0.0, %v8340
  %8342 = vmatmul.f32.gmra.mxu0 %v5055
  %v8343 = vpop.f32.mrf.mxu0
  %v8344 = vadd.f32 0.0, %v8343
  %8345 = vmatmul.f32.gmra.mxu0 %v5060
  %v8346 = vpop.f32.mrf.mxu0
  %v8347 = vadd.f32 0.0, %v8346
  %8348 = vmatmul.f32.gmra.mxu0 %v5061
  %v8349 = vpop.f32.mrf.mxu0
  %v8350 = vadd.f32 0.0, %v8349
  %8351 = vmatmul.f32.gmra.mxu0 %v5062
  %v8352 = vpop.f32.mrf.mxu0
  %v8353 = vadd.f32 0.0, %v8352
  %8354 = vmatmul.f32.gmra.mxu0 %v5063
  %v8355 = vpop.f32.mrf.mxu0
  %v8356 = vadd.f32 0.0, %v8355
  %8357 = vmatmul.f32.gmra.mxu0 %v5064
  %v8358 = vpop.f32.mrf.mxu0
  %v8359 = vadd.f32 0.0, %v8358
  %8360 = vmatmul.f32.gmra.mxu0 %v5065
  %v8361 = vpop.f32.mrf.mxu0
  %v8362 = vadd.f32 0.0, %v8361
  %8363 = vmatmul.f32.gmra.mxu0 %v5066
  %v8364 = vpop.f32.mrf.mxu0
  %v8365 = vadd.f32 0.0, %v8364
  %8366 = vmatmul.f32.gmra.mxu0 %v5067
  %v8367 = vpop.f32.mrf.mxu0
  %v8368 = vadd.f32 0.0, %v8367
  %8369 = vmatmul.f32.gmra.mxu0 %v5072
  %v8370 = vpop.f32.mrf.mxu0
  %v8371 = vadd.f32 0.0, %v8370
  %8372 = vmatmul.f32.gmra.mxu0 %v5073
  %v8373 = vpop.f32.mrf.mxu0
  %v8374 = vadd.f32 0.0, %v8373
  %8375 = vmatmul.f32.gmra.mxu0 %v5074
  %v8376 = vpop.f32.mrf.mxu0
  %v8377 = vadd.f32 0.0, %v8376
  %8378 = vmatmul.f32.gmra.mxu0 %v5075
  %v8379 = vpop.f32.mrf.mxu0
  %v8380 = vadd.f32 0.0, %v8379
  %8381 = vmatmul.f32.gmra.mxu0 %v5076
  %v8382 = vpop.f32.mrf.mxu0
  %v8383 = vadd.f32 0.0, %v8382
  %8384 = vmatmul.f32.gmra.mxu0 %v5077
  %v8385 = vpop.f32.mrf.mxu0
  %v8386 = vadd.f32 0.0, %v8385
  %8387 = vmatmul.f32.gmra.mxu0 %v5078
  %v8388 = vpop.f32.mrf.mxu0
  %v8389 = vadd.f32 0.0, %v8388
  %8390 = vmatmul.f32.gmra.mxu0 %v5079
  %v8391 = vpop.f32.mrf.mxu0
  %v8392 = vadd.f32 0.0, %v8391
  %8393 = vdwg.mxu0
  %v8394 = vadd.f32 %v8104, %v8203
  %v8395 = vadd.f32 %v8105, %v8206
  %v8396 = vadd.f32 %v8106, %v8209
  %v8397 = vadd.f32 %v8107, %v8212
  %v8398 = vadd.f32 %v8108, %v8215
  %v8399 = vadd.f32 %v8109, %v8218
  %v8400 = vadd.f32 %v8110, %v8221
  %v8401 = vadd.f32 %v8111, %v8224
  %v8402 = vadd.f32 %v8112, %v8227
  %v8403 = vadd.f32 %v8113, %v8230
  %v8404 = vadd.f32 %v8114, %v8233
  %v8405 = vadd.f32 %v8115, %v8236
  %v8406 = vadd.f32 %v8116, %v8239
  %v8407 = vadd.f32 %v8117, %v8242
  %v8408 = vadd.f32 %v8118, %v8245
  %v8409 = vadd.f32 %v8119, %v8248
  %v8410 = vadd.f32 %v8120, %v8251
  %v8411 = vadd.f32 %v8121, %v8254
  %v8412 = vadd.f32 %v8122, %v8257
  %v8413 = vadd.f32 %v8123, %v8260
  %v8414 = vadd.f32 %v8124, %v8263
  %v8415 = vadd.f32 %v8125, %v8266
  %v8416 = vadd.f32 %v8126, %v8269
  %v8417 = vadd.f32 %v8127, %v8272
  %v8418 = vadd.f32 %v8128, %v8275
  %v8419 = vadd.f32 %v8129, %v8278
  %v8420 = vadd.f32 %v8130, %v8281
  %v8421 = vadd.f32 %v8131, %v8284
  %v8422 = vadd.f32 %v8132, %v8287
  %v8423 = vadd.f32 %v8133, %v8290
  %v8424 = vadd.f32 %v8134, %v8293
  %v8425 = vadd.f32 %v8135, %v8296
  %v8426 = vadd.f32 %v8136, %v8299
  %v8427 = vadd.f32 %v8137, %v8302
  %v8428 = vadd.f32 %v8138, %v8305
  %v8429 = vadd.f32 %v8139, %v8308
  %v8430 = vadd.f32 %v8140, %v8311
  %v8431 = vadd.f32 %v8141, %v8314
  %v8432 = vadd.f32 %v8142, %v8317
  %v8433 = vadd.f32 %v8143, %v8320
  %v8434 = vadd.f32 %v8144, %v8323
  %v8435 = vadd.f32 %v8145, %v8326
  %v8436 = vadd.f32 %v8146, %v8329
  %v8437 = vadd.f32 %v8147, %v8332
  %v8438 = vadd.f32 %v8148, %v8335
  %v8439 = vadd.f32 %v8149, %v8338
  %v8440 = vadd.f32 %v8150, %v8341
  %v8441 = vadd.f32 %v8151, %v8344
  %v8442 = vadd.f32 %v8152, %v8347
  %v8443 = vadd.f32 %v8153, %v8350
  %v8444 = vadd.f32 %v8154, %v8353
  %v8445 = vadd.f32 %v8155, %v8356
  %v8446 = vadd.f32 %v8156, %v8359
  %v8447 = vadd.f32 %v8157, %v8362
  %v8448 = vadd.f32 %v8158, %v8365
  %v8449 = vadd.f32 %v8159, %v8368
  %v8450 = vadd.f32 %v8160, %v8371
  %v8451 = vadd.f32 %v8161, %v8374
  %v8452 = vadd.f32 %v8162, %v8377
  %v8453 = vadd.f32 %v8163, %v8380
  %v8454 = vadd.f32 %v8164, %v8383
  %v8455 = vadd.f32 %v8165, %v8386
  %v8456 = vadd.f32 %v8166, %v8389
  %v8457 = vadd.f32 %v8167, %v8392
  %s8458 = scalar_lea.vmem %s4, 1536
  %v8459 = vld [vmem:[%s8458] sm:$0xff]
  %v8460 = vld [vmem:[%s8458 + $0x8] sm:$0xff]
  %v8461 = vld [vmem:[%s8458 + $0x10] sm:$0xff]
  %v8462 = vld [vmem:[%s8458 + $0x18] sm:$0xff]
  %v8463 = vld [vmem:[%s8458 + $0x20] sm:$0xff]
  %v8464 = vld [vmem:[%s8458 + $0x28] sm:$0xff]
  %v8465 = vld [vmem:[%s8458 + $0x30] sm:$0xff]
  %v8466 = vld [vmem:[%s8458 + $0x38] sm:$0xff]
  %v8467 = vld [vmem:[%s8458 + $0x40] sm:$0xff]
  %v8468 = vld [vmem:[%s8458 + $0x48] sm:$0xff]
  %v8469 = vld [vmem:[%s8458 + $0x50] sm:$0xff]
  %v8470 = vld [vmem:[%s8458 + $0x58] sm:$0xff]
  %v8471 = vld [vmem:[%s8458 + $0x60] sm:$0xff]
  %v8472 = vld [vmem:[%s8458 + $0x68] sm:$0xff]
  %v8473 = vld [vmem:[%s8458 + $0x70] sm:$0xff]
  %v8474 = vld [vmem:[%s8458 + $0x78] sm:$0xff]
  %8475 = vmatpush.msra.mxu0 %v8474
  %8476 = vmatpush.msra.mxu0 %v8473
  %8477 = vmatpush.msra.mxu0 %v8472
  %8478 = vmatpush.msra.mxu0 %v8471
  %8479 = vmatpush.msra.mxu0 %v8470
  %8480 = vmatpush.msra.mxu0 %v8469
  %8481 = vmatpush.msra.mxu0 %v8468
  %8482 = vmatpush.msra.mxu0 %v8467
  %8483 = vmatpush.msra.mxu0 %v8466
  %8484 = vmatpush.msra.mxu0 %v8465
  %8485 = vmatpush.msra.mxu0 %v8464
  %8486 = vmatpush.msra.mxu0 %v8463
  %8487 = vmatpush.msra.mxu0 %v8462
  %8488 = vmatpush.msra.mxu0 %v8461
  %8489 = vmatpush.msra.mxu0 %v8460
  %8490 = vmatpush.msra.mxu0 %v8459
  %8491 = vmatmul.f32.gmra.mxu0 %v4989
  %v8492 = vpop.f32.mrf.mxu0
  %v8493 = vadd.f32 0.0, %v8492
  %8494 = vmatmul.f32.gmra.mxu0 %v4990
  %v8495 = vpop.f32.mrf.mxu0
  %v8496 = vadd.f32 0.0, %v8495
  %8497 = vmatmul.f32.gmra.mxu0 %v4991
  %v8498 = vpop.f32.mrf.mxu0
  %v8499 = vadd.f32 0.0, %v8498
  %8500 = vmatmul.f32.gmra.mxu0 %v4992
  %v8501 = vpop.f32.mrf.mxu0
  %v8502 = vadd.f32 0.0, %v8501
  %8503 = vmatmul.f32.gmra.mxu0 %v4993
  %v8504 = vpop.f32.mrf.mxu0
  %v8505 = vadd.f32 0.0, %v8504
  %8506 = vmatmul.f32.gmra.mxu0 %v4994
  %v8507 = vpop.f32.mrf.mxu0
  %v8508 = vadd.f32 0.0, %v8507
  %8509 = vmatmul.f32.gmra.mxu0 %v4995
  %v8510 = vpop.f32.mrf.mxu0
  %v8511 = vadd.f32 0.0, %v8510
  %8512 = vmatmul.f32.gmra.mxu0 %v4996
  %v8513 = vpop.f32.mrf.mxu0
  %v8514 = vadd.f32 0.0, %v8513
  %8515 = vmatmul.f32.gmra.mxu0 %v5001
  %v8516 = vpop.f32.mrf.mxu0
  %v8517 = vadd.f32 0.0, %v8516
  %8518 = vmatmul.f32.gmra.mxu0 %v5002
  %v8519 = vpop.f32.mrf.mxu0
  %v8520 = vadd.f32 0.0, %v8519
  %8521 = vmatmul.f32.gmra.mxu0 %v5003
  %v8522 = vpop.f32.mrf.mxu0
  %v8523 = vadd.f32 0.0, %v8522
  %8524 = vmatmul.f32.gmra.mxu0 %v5004
  %v8525 = vpop.f32.mrf.mxu0
  %v8526 = vadd.f32 0.0, %v8525
  %8527 = vmatmul.f32.gmra.mxu0 %v5005
  %v8528 = vpop.f32.mrf.mxu0
  %v8529 = vadd.f32 0.0, %v8528
  %8530 = vmatmul.f32.gmra.mxu0 %v5006
  %v8531 = vpop.f32.mrf.mxu0
  %v8532 = vadd.f32 0.0, %v8531
  %8533 = vmatmul.f32.gmra.mxu0 %v5007
  %v8534 = vpop.f32.mrf.mxu0
  %v8535 = vadd.f32 0.0, %v8534
  %8536 = vmatmul.f32.gmra.mxu0 %v5008
  %v8537 = vpop.f32.mrf.mxu0
  %v8538 = vadd.f32 0.0, %v8537
  %8539 = vmatmul.f32.gmra.mxu0 %v5013
  %v8540 = vpop.f32.mrf.mxu0
  %v8541 = vadd.f32 0.0, %v8540
  %8542 = vmatmul.f32.gmra.mxu0 %v5014
  %v8543 = vpop.f32.mrf.mxu0
  %v8544 = vadd.f32 0.0, %v8543
  %8545 = vmatmul.f32.gmra.mxu0 %v5015
  %v8546 = vpop.f32.mrf.mxu0
  %v8547 = vadd.f32 0.0, %v8546
  %8548 = vmatmul.f32.gmra.mxu0 %v5016
  %v8549 = vpop.f32.mrf.mxu0
  %v8550 = vadd.f32 0.0, %v8549
  %8551 = vmatmul.f32.gmra.mxu0 %v5017
  %v8552 = vpop.f32.mrf.mxu0
  %v8553 = vadd.f32 0.0, %v8552
  %8554 = vmatmul.f32.gmra.mxu0 %v5018
  %v8555 = vpop.f32.mrf.mxu0
  %v8556 = vadd.f32 0.0, %v8555
  %8557 = vmatmul.f32.gmra.mxu0 %v5019
  %v8558 = vpop.f32.mrf.mxu0
  %v8559 = vadd.f32 0.0, %v8558
  %8560 = vmatmul.f32.gmra.mxu0 %v5020
  %v8561 = vpop.f32.mrf.mxu0
  %v8562 = vadd.f32 0.0, %v8561
  %8563 = vmatmul.f32.gmra.mxu0 %v5025
  %v8564 = vpop.f32.mrf.mxu0
  %v8565 = vadd.f32 0.0, %v8564
  %8566 = vmatmul.f32.gmra.mxu0 %v5026
  %v8567 = vpop.f32.mrf.mxu0
  %v8568 = vadd.f32 0.0, %v8567
  %8569 = vmatmul.f32.gmra.mxu0 %v5027
  %v8570 = vpop.f32.mrf.mxu0
  %v8571 = vadd.f32 0.0, %v8570
  %8572 = vmatmul.f32.gmra.mxu0 %v5028
  %v8573 = vpop.f32.mrf.mxu0
  %v8574 = vadd.f32 0.0, %v8573
  %8575 = vmatmul.f32.gmra.mxu0 %v5029
  %v8576 = vpop.f32.mrf.mxu0
  %v8577 = vadd.f32 0.0, %v8576
  %8578 = vmatmul.f32.gmra.mxu0 %v5030
  %v8579 = vpop.f32.mrf.mxu0
  %v8580 = vadd.f32 0.0, %v8579
  %8581 = vmatmul.f32.gmra.mxu0 %v5031
  %v8582 = vpop.f32.mrf.mxu0
  %v8583 = vadd.f32 0.0, %v8582
  %8584 = vmatmul.f32.gmra.mxu0 %v5032
  %v8585 = vpop.f32.mrf.mxu0
  %v8586 = vadd.f32 0.0, %v8585
  %8587 = vmatmul.f32.gmra.mxu0 %v5037
  %v8588 = vpop.f32.mrf.mxu0
  %v8589 = vadd.f32 0.0, %v8588
  %8590 = vmatmul.f32.gmra.mxu0 %v5038
  %v8591 = vpop.f32.mrf.mxu0
  %v8592 = vadd.f32 0.0, %v8591
  %8593 = vmatmul.f32.gmra.mxu0 %v5039
  %v8594 = vpop.f32.mrf.mxu0
  %v8595 = vadd.f32 0.0, %v8594
  %8596 = vmatmul.f32.gmra.mxu0 %v5040
  %v8597 = vpop.f32.mrf.mxu0
  %v8598 = vadd.f32 0.0, %v8597
  %8599 = vmatmul.f32.gmra.mxu0 %v5041
  %v8600 = vpop.f32.mrf.mxu0
  %v8601 = vadd.f32 0.0, %v8600
  %8602 = vmatmul.f32.gmra.mxu0 %v5042
  %v8603 = vpop.f32.mrf.mxu0
  %v8604 = vadd.f32 0.0, %v8603
  %8605 = vmatmul.f32.gmra.mxu0 %v5043
  %v8606 = vpop.f32.mrf.mxu0
  %v8607 = vadd.f32 0.0, %v8606
  %8608 = vmatmul.f32.gmra.mxu0 %v5044
  %v8609 = vpop.f32.mrf.mxu0
  %v8610 = vadd.f32 0.0, %v8609
  %8611 = vmatmul.f32.gmra.mxu0 %v5049
  %v8612 = vpop.f32.mrf.mxu0
  %v8613 = vadd.f32 0.0, %v8612
  %8614 = vmatmul.f32.gmra.mxu0 %v5050
  %v8615 = vpop.f32.mrf.mxu0
  %v8616 = vadd.f32 0.0, %v8615
  %8617 = vmatmul.f32.gmra.mxu0 %v5051
  %v8618 = vpop.f32.mrf.mxu0
  %v8619 = vadd.f32 0.0, %v8618
  %8620 = vmatmul.f32.gmra.mxu0 %v5052
  %v8621 = vpop.f32.mrf.mxu0
  %v8622 = vadd.f32 0.0, %v8621
  %8623 = vmatmul.f32.gmra.mxu0 %v5053
  %v8624 = vpop.f32.mrf.mxu0
  %v8625 = vadd.f32 0.0, %v8624
  %8626 = vmatmul.f32.gmra.mxu0 %v5054
  %v8627 = vpop.f32.mrf.mxu0
  %v8628 = vadd.f32 0.0, %v8627
  %8629 = vmatmul.f32.gmra.mxu0 %v5055
  %v8630 = vpop.f32.mrf.mxu0
  %v8631 = vadd.f32 0.0, %v8630
  %8632 = vmatmul.f32.gmra.mxu0 %v5056
  %v8633 = vpop.f32.mrf.mxu0
  %v8634 = vadd.f32 0.0, %v8633
  %8635 = vmatmul.f32.gmra.mxu0 %v5061
  %v8636 = vpop.f32.mrf.mxu0
  %v8637 = vadd.f32 0.0, %v8636
  %8638 = vmatmul.f32.gmra.mxu0 %v5062
  %v8639 = vpop.f32.mrf.mxu0
  %v8640 = vadd.f32 0.0, %v8639
  %8641 = vmatmul.f32.gmra.mxu0 %v5063
  %v8642 = vpop.f32.mrf.mxu0
  %v8643 = vadd.f32 0.0, %v8642
  %8644 = vmatmul.f32.gmra.mxu0 %v5064
  %v8645 = vpop.f32.mrf.mxu0
  %v8646 = vadd.f32 0.0, %v8645
  %8647 = vmatmul.f32.gmra.mxu0 %v5065
  %v8648 = vpop.f32.mrf.mxu0
  %v8649 = vadd.f32 0.0, %v8648
  %8650 = vmatmul.f32.gmra.mxu0 %v5066
  %v8651 = vpop.f32.mrf.mxu0
  %v8652 = vadd.f32 0.0, %v8651
  %8653 = vmatmul.f32.gmra.mxu0 %v5067
  %v8654 = vpop.f32.mrf.mxu0
  %v8655 = vadd.f32 0.0, %v8654
  %8656 = vmatmul.f32.gmra.mxu0 %v5068
  %v8657 = vpop.f32.mrf.mxu0
  %v8658 = vadd.f32 0.0, %v8657
  %8659 = vmatmul.f32.gmra.mxu0 %v5073
  %v8660 = vpop.f32.mrf.mxu0
  %v8661 = vadd.f32 0.0, %v8660
  %8662 = vmatmul.f32.gmra.mxu0 %v5074
  %v8663 = vpop.f32.mrf.mxu0
  %v8664 = vadd.f32 0.0, %v8663
  %8665 = vmatmul.f32.gmra.mxu0 %v5075
  %v8666 = vpop.f32.mrf.mxu0
  %v8667 = vadd.f32 0.0, %v8666
  %8668 = vmatmul.f32.gmra.mxu0 %v5076
  %v8669 = vpop.f32.mrf.mxu0
  %v8670 = vadd.f32 0.0, %v8669
  %8671 = vmatmul.f32.gmra.mxu0 %v5077
  %v8672 = vpop.f32.mrf.mxu0
  %v8673 = vadd.f32 0.0, %v8672
  %8674 = vmatmul.f32.gmra.mxu0 %v5078
  %v8675 = vpop.f32.mrf.mxu0
  %v8676 = vadd.f32 0.0, %v8675
  %8677 = vmatmul.f32.gmra.mxu0 %v5079
  %v8678 = vpop.f32.mrf.mxu0
  %v8679 = vadd.f32 0.0, %v8678
  %8680 = vmatmul.f32.gmra.mxu0 %v5080
  %v8681 = vpop.f32.mrf.mxu0
  %v8682 = vadd.f32 0.0, %v8681
  %8683 = vdwg.mxu0
  %v8684 = vadd.f32 %v8394, %v8493
  %v8685 = vadd.f32 %v8395, %v8496
  %v8686 = vadd.f32 %v8396, %v8499
  %v8687 = vadd.f32 %v8397, %v8502
  %v8688 = vadd.f32 %v8398, %v8505
  %v8689 = vadd.f32 %v8399, %v8508
  %v8690 = vadd.f32 %v8400, %v8511
  %v8691 = vadd.f32 %v8401, %v8514
  %v8692 = vadd.f32 %v8402, %v8517
  %v8693 = vadd.f32 %v8403, %v8520
  %v8694 = vadd.f32 %v8404, %v8523
  %v8695 = vadd.f32 %v8405, %v8526
  %v8696 = vadd.f32 %v8406, %v8529
  %v8697 = vadd.f32 %v8407, %v8532
  %v8698 = vadd.f32 %v8408, %v8535
  %v8699 = vadd.f32 %v8409, %v8538
  %v8700 = vadd.f32 %v8410, %v8541
  %v8701 = vadd.f32 %v8411, %v8544
  %v8702 = vadd.f32 %v8412, %v8547
  %v8703 = vadd.f32 %v8413, %v8550
  %v8704 = vadd.f32 %v8414, %v8553
  %v8705 = vadd.f32 %v8415, %v8556
  %v8706 = vadd.f32 %v8416, %v8559
  %v8707 = vadd.f32 %v8417, %v8562
  %v8708 = vadd.f32 %v8418, %v8565
  %v8709 = vadd.f32 %v8419, %v8568
  %v8710 = vadd.f32 %v8420, %v8571
  %v8711 = vadd.f32 %v8421, %v8574
  %v8712 = vadd.f32 %v8422, %v8577
  %v8713 = vadd.f32 %v8423, %v8580
  %v8714 = vadd.f32 %v8424, %v8583
  %v8715 = vadd.f32 %v8425, %v8586
  %v8716 = vadd.f32 %v8426, %v8589
  %v8717 = vadd.f32 %v8427, %v8592
  %v8718 = vadd.f32 %v8428, %v8595
  %v8719 = vadd.f32 %v8429, %v8598
  %v8720 = vadd.f32 %v8430, %v8601
  %v8721 = vadd.f32 %v8431, %v8604
  %v8722 = vadd.f32 %v8432, %v8607
  %v8723 = vadd.f32 %v8433, %v8610
  %v8724 = vadd.f32 %v8434, %v8613
  %v8725 = vadd.f32 %v8435, %v8616
  %v8726 = vadd.f32 %v8436, %v8619
  %v8727 = vadd.f32 %v8437, %v8622
  %v8728 = vadd.f32 %v8438, %v8625
  %v8729 = vadd.f32 %v8439, %v8628
  %v8730 = vadd.f32 %v8440, %v8631
  %v8731 = vadd.f32 %v8441, %v8634
  %v8732 = vadd.f32 %v8442, %v8637
  %v8733 = vadd.f32 %v8443, %v8640
  %v8734 = vadd.f32 %v8444, %v8643
  %v8735 = vadd.f32 %v8445, %v8646
  %v8736 = vadd.f32 %v8446, %v8649
  %v8737 = vadd.f32 %v8447, %v8652
  %v8738 = vadd.f32 %v8448, %v8655
  %v8739 = vadd.f32 %v8449, %v8658
  %v8740 = vadd.f32 %v8450, %v8661
  %v8741 = vadd.f32 %v8451, %v8664
  %v8742 = vadd.f32 %v8452, %v8667
  %v8743 = vadd.f32 %v8453, %v8670
  %v8744 = vadd.f32 %v8454, %v8673
  %v8745 = vadd.f32 %v8455, %v8676
  %v8746 = vadd.f32 %v8456, %v8679
  %v8747 = vadd.f32 %v8457, %v8682
  %s8748 = scalar_lea.vmem %s4, 1664
  %v8749 = vld [vmem:[%s8748] sm:$0xff]
  %v8750 = vld [vmem:[%s8748 + $0x8] sm:$0xff]
  %v8751 = vld [vmem:[%s8748 + $0x10] sm:$0xff]
  %v8752 = vld [vmem:[%s8748 + $0x18] sm:$0xff]
  %v8753 = vld [vmem:[%s8748 + $0x20] sm:$0xff]
  %v8754 = vld [vmem:[%s8748 + $0x28] sm:$0xff]
  %v8755 = vld [vmem:[%s8748 + $0x30] sm:$0xff]
  %v8756 = vld [vmem:[%s8748 + $0x38] sm:$0xff]
  %v8757 = vld [vmem:[%s8748 + $0x40] sm:$0xff]
  %v8758 = vld [vmem:[%s8748 + $0x48] sm:$0xff]
  %v8759 = vld [vmem:[%s8748 + $0x50] sm:$0xff]
  %v8760 = vld [vmem:[%s8748 + $0x58] sm:$0xff]
  %v8761 = vld [vmem:[%s8748 + $0x60] sm:$0xff]
  %v8762 = vld [vmem:[%s8748 + $0x68] sm:$0xff]
  %v8763 = vld [vmem:[%s8748 + $0x70] sm:$0xff]
  %v8764 = vld [vmem:[%s8748 + $0x78] sm:$0xff]
  %8765 = vmatpush.msra.mxu0 %v8764
  %8766 = vmatpush.msra.mxu0 %v8763
  %8767 = vmatpush.msra.mxu0 %v8762
  %8768 = vmatpush.msra.mxu0 %v8761
  %8769 = vmatpush.msra.mxu0 %v8760
  %8770 = vmatpush.msra.mxu0 %v8759
  %8771 = vmatpush.msra.mxu0 %v8758
  %8772 = vmatpush.msra.mxu0 %v8757
  %8773 = vmatpush.msra.mxu0 %v8756
  %8774 = vmatpush.msra.mxu0 %v8755
  %8775 = vmatpush.msra.mxu0 %v8754
  %8776 = vmatpush.msra.mxu0 %v8753
  %8777 = vmatpush.msra.mxu0 %v8752
  %8778 = vmatpush.msra.mxu0 %v8751
  %8779 = vmatpush.msra.mxu0 %v8750
  %8780 = vmatpush.msra.mxu0 %v8749
  %8781 = vmatmul.f32.gmra.mxu0 %v4990
  %v8782 = vpop.f32.mrf.mxu0
  %v8783 = vadd.f32 0.0, %v8782
  %8784 = vmatmul.f32.gmra.mxu0 %v4991
  %v8785 = vpop.f32.mrf.mxu0
  %v8786 = vadd.f32 0.0, %v8785
  %8787 = vmatmul.f32.gmra.mxu0 %v4992
  %v8788 = vpop.f32.mrf.mxu0
  %v8789 = vadd.f32 0.0, %v8788
  %8790 = vmatmul.f32.gmra.mxu0 %v4993
  %v8791 = vpop.f32.mrf.mxu0
  %v8792 = vadd.f32 0.0, %v8791
  %8793 = vmatmul.f32.gmra.mxu0 %v4994
  %v8794 = vpop.f32.mrf.mxu0
  %v8795 = vadd.f32 0.0, %v8794
  %8796 = vmatmul.f32.gmra.mxu0 %v4995
  %v8797 = vpop.f32.mrf.mxu0
  %v8798 = vadd.f32 0.0, %v8797
  %8799 = vmatmul.f32.gmra.mxu0 %v4996
  %v8800 = vpop.f32.mrf.mxu0
  %v8801 = vadd.f32 0.0, %v8800
  %8802 = vmatmul.f32.gmra.mxu0 %v4997
  %v8803 = vpop.f32.mrf.mxu0
  %v8804 = vadd.f32 0.0, %v8803
  %8805 = vmatmul.f32.gmra.mxu0 %v5002
  %v8806 = vpop.f32.mrf.mxu0
  %v8807 = vadd.f32 0.0, %v8806
  %8808 = vmatmul.f32.gmra.mxu0 %v5003
  %v8809 = vpop.f32.mrf.mxu0
  %v8810 = vadd.f32 0.0, %v8809
  %8811 = vmatmul.f32.gmra.mxu0 %v5004
  %v8812 = vpop.f32.mrf.mxu0
  %v8813 = vadd.f32 0.0, %v8812
  %8814 = vmatmul.f32.gmra.mxu0 %v5005
  %v8815 = vpop.f32.mrf.mxu0
  %v8816 = vadd.f32 0.0, %v8815
  %8817 = vmatmul.f32.gmra.mxu0 %v5006
  %v8818 = vpop.f32.mrf.mxu0
  %v8819 = vadd.f32 0.0, %v8818
  %8820 = vmatmul.f32.gmra.mxu0 %v5007
  %v8821 = vpop.f32.mrf.mxu0
  %v8822 = vadd.f32 0.0, %v8821
  %8823 = vmatmul.f32.gmra.mxu0 %v5008
  %v8824 = vpop.f32.mrf.mxu0
  %v8825 = vadd.f32 0.0, %v8824
  %8826 = vmatmul.f32.gmra.mxu0 %v5009
  %v8827 = vpop.f32.mrf.mxu0
  %v8828 = vadd.f32 0.0, %v8827
  %8829 = vmatmul.f32.gmra.mxu0 %v5014
  %v8830 = vpop.f32.mrf.mxu0
  %v8831 = vadd.f32 0.0, %v8830
  %8832 = vmatmul.f32.gmra.mxu0 %v5015
  %v8833 = vpop.f32.mrf.mxu0
  %v8834 = vadd.f32 0.0, %v8833
  %8835 = vmatmul.f32.gmra.mxu0 %v5016
  %v8836 = vpop.f32.mrf.mxu0
  %v8837 = vadd.f32 0.0, %v8836
  %8838 = vmatmul.f32.gmra.mxu0 %v5017
  %v8839 = vpop.f32.mrf.mxu0
  %v8840 = vadd.f32 0.0, %v8839
  %8841 = vmatmul.f32.gmra.mxu0 %v5018
  %v8842 = vpop.f32.mrf.mxu0
  %v8843 = vadd.f32 0.0, %v8842
  %8844 = vmatmul.f32.gmra.mxu0 %v5019
  %v8845 = vpop.f32.mrf.mxu0
  %v8846 = vadd.f32 0.0, %v8845
  %8847 = vmatmul.f32.gmra.mxu0 %v5020
  %v8848 = vpop.f32.mrf.mxu0
  %v8849 = vadd.f32 0.0, %v8848
  %8850 = vmatmul.f32.gmra.mxu0 %v5021
  %v8851 = vpop.f32.mrf.mxu0
  %v8852 = vadd.f32 0.0, %v8851
  %8853 = vmatmul.f32.gmra.mxu0 %v5026
  %v8854 = vpop.f32.mrf.mxu0
  %v8855 = vadd.f32 0.0, %v8854
  %8856 = vmatmul.f32.gmra.mxu0 %v5027
  %v8857 = vpop.f32.mrf.mxu0
  %v8858 = vadd.f32 0.0, %v8857
  %8859 = vmatmul.f32.gmra.mxu0 %v5028
  %v8860 = vpop.f32.mrf.mxu0
  %v8861 = vadd.f32 0.0, %v8860
  %8862 = vmatmul.f32.gmra.mxu0 %v5029
  %v8863 = vpop.f32.mrf.mxu0
  %v8864 = vadd.f32 0.0, %v8863
  %8865 = vmatmul.f32.gmra.mxu0 %v5030
  %v8866 = vpop.f32.mrf.mxu0
  %v8867 = vadd.f32 0.0, %v8866
  %8868 = vmatmul.f32.gmra.mxu0 %v5031
  %v8869 = vpop.f32.mrf.mxu0
  %v8870 = vadd.f32 0.0, %v8869
  %8871 = vmatmul.f32.gmra.mxu0 %v5032
  %v8872 = vpop.f32.mrf.mxu0
  %v8873 = vadd.f32 0.0, %v8872
  %8874 = vmatmul.f32.gmra.mxu0 %v5033
  %v8875 = vpop.f32.mrf.mxu0
  %v8876 = vadd.f32 0.0, %v8875
  %8877 = vmatmul.f32.gmra.mxu0 %v5038
  %v8878 = vpop.f32.mrf.mxu0
  %v8879 = vadd.f32 0.0, %v8878
  %8880 = vmatmul.f32.gmra.mxu0 %v5039
  %v8881 = vpop.f32.mrf.mxu0
  %v8882 = vadd.f32 0.0, %v8881
  %8883 = vmatmul.f32.gmra.mxu0 %v5040
  %v8884 = vpop.f32.mrf.mxu0
  %v8885 = vadd.f32 0.0, %v8884
  %8886 = vmatmul.f32.gmra.mxu0 %v5041
  %v8887 = vpop.f32.mrf.mxu0
  %v8888 = vadd.f32 0.0, %v8887
  %8889 = vmatmul.f32.gmra.mxu0 %v5042
  %v8890 = vpop.f32.mrf.mxu0
  %v8891 = vadd.f32 0.0, %v8890
  %8892 = vmatmul.f32.gmra.mxu0 %v5043
  %v8893 = vpop.f32.mrf.mxu0
  %v8894 = vadd.f32 0.0, %v8893
  %8895 = vmatmul.f32.gmra.mxu0 %v5044
  %v8896 = vpop.f32.mrf.mxu0
  %v8897 = vadd.f32 0.0, %v8896
  %8898 = vmatmul.f32.gmra.mxu0 %v5045
  %v8899 = vpop.f32.mrf.mxu0
  %v8900 = vadd.f32 0.0, %v8899
  %8901 = vmatmul.f32.gmra.mxu0 %v5050
  %v8902 = vpop.f32.mrf.mxu0
  %v8903 = vadd.f32 0.0, %v8902
  %8904 = vmatmul.f32.gmra.mxu0 %v5051
  %v8905 = vpop.f32.mrf.mxu0
  %v8906 = vadd.f32 0.0, %v8905
  %8907 = vmatmul.f32.gmra.mxu0 %v5052
  %v8908 = vpop.f32.mrf.mxu0
  %v8909 = vadd.f32 0.0, %v8908
  %8910 = vmatmul.f32.gmra.mxu0 %v5053
  %v8911 = vpop.f32.mrf.mxu0
  %v8912 = vadd.f32 0.0, %v8911
  %8913 = vmatmul.f32.gmra.mxu0 %v5054
  %v8914 = vpop.f32.mrf.mxu0
  %v8915 = vadd.f32 0.0, %v8914
  %8916 = vmatmul.f32.gmra.mxu0 %v5055
  %v8917 = vpop.f32.mrf.mxu0
  %v8918 = vadd.f32 0.0, %v8917
  %8919 = vmatmul.f32.gmra.mxu0 %v5056
  %v8920 = vpop.f32.mrf.mxu0
  %v8921 = vadd.f32 0.0, %v8920
  %8922 = vmatmul.f32.gmra.mxu0 %v5057
  %v8923 = vpop.f32.mrf.mxu0
  %v8924 = vadd.f32 0.0, %v8923
  %8925 = vmatmul.f32.gmra.mxu0 %v5062
  %v8926 = vpop.f32.mrf.mxu0
  %v8927 = vadd.f32 0.0, %v8926
  %8928 = vmatmul.f32.gmra.mxu0 %v5063
  %v8929 = vpop.f32.mrf.mxu0
  %v8930 = vadd.f32 0.0, %v8929
  %8931 = vmatmul.f32.gmra.mxu0 %v5064
  %v8932 = vpop.f32.mrf.mxu0
  %v8933 = vadd.f32 0.0, %v8932
  %8934 = vmatmul.f32.gmra.mxu0 %v5065
  %v8935 = vpop.f32.mrf.mxu0
  %v8936 = vadd.f32 0.0, %v8935
  %8937 = vmatmul.f32.gmra.mxu0 %v5066
  %v8938 = vpop.f32.mrf.mxu0
  %v8939 = vadd.f32 0.0, %v8938
  %8940 = vmatmul.f32.gmra.mxu0 %v5067
  %v8941 = vpop.f32.mrf.mxu0
  %v8942 = vadd.f32 0.0, %v8941
  %8943 = vmatmul.f32.gmra.mxu0 %v5068
  %v8944 = vpop.f32.mrf.mxu0
  %v8945 = vadd.f32 0.0, %v8944
  %8946 = vmatmul.f32.gmra.mxu0 %v5069
  %v8947 = vpop.f32.mrf.mxu0
  %v8948 = vadd.f32 0.0, %v8947
  %8949 = vmatmul.f32.gmra.mxu0 %v5074
  %v8950 = vpop.f32.mrf.mxu0
  %v8951 = vadd.f32 0.0, %v8950
  %8952 = vmatmul.f32.gmra.mxu0 %v5075
  %v8953 = vpop.f32.mrf.mxu0
  %v8954 = vadd.f32 0.0, %v8953
  %8955 = vmatmul.f32.gmra.mxu0 %v5076
  %v8956 = vpop.f32.mrf.mxu0
  %v8957 = vadd.f32 0.0, %v8956
  %8958 = vmatmul.f32.gmra.mxu0 %v5077
  %v8959 = vpop.f32.mrf.mxu0
  %v8960 = vadd.f32 0.0, %v8959
  %8961 = vmatmul.f32.gmra.mxu0 %v5078
  %v8962 = vpop.f32.mrf.mxu0
  %v8963 = vadd.f32 0.0, %v8962
  %8964 = vmatmul.f32.gmra.mxu0 %v5079
  %v8965 = vpop.f32.mrf.mxu0
  %v8966 = vadd.f32 0.0, %v8965
  %8967 = vmatmul.f32.gmra.mxu0 %v5080
  %v8968 = vpop.f32.mrf.mxu0
  %v8969 = vadd.f32 0.0, %v8968
  %8970 = vmatmul.f32.gmra.mxu0 %v5081
  %v8971 = vpop.f32.mrf.mxu0
  %v8972 = vadd.f32 0.0, %v8971
  %8973 = vdwg.mxu0
  %v8974 = vadd.f32 %v8684, %v8783
  %v8975 = vadd.f32 %v8685, %v8786
  %v8976 = vadd.f32 %v8686, %v8789
  %v8977 = vadd.f32 %v8687, %v8792
  %v8978 = vadd.f32 %v8688, %v8795
  %v8979 = vadd.f32 %v8689, %v8798
  %v8980 = vadd.f32 %v8690, %v8801
  %v8981 = vadd.f32 %v8691, %v8804
  %v8982 = vadd.f32 %v8692, %v8807
  %v8983 = vadd.f32 %v8693, %v8810
  %v8984 = vadd.f32 %v8694, %v8813
  %v8985 = vadd.f32 %v8695, %v8816
  %v8986 = vadd.f32 %v8696, %v8819
  %v8987 = vadd.f32 %v8697, %v8822
  %v8988 = vadd.f32 %v8698, %v8825
  %v8989 = vadd.f32 %v8699, %v8828
  %v8990 = vadd.f32 %v8700, %v8831
  %v8991 = vadd.f32 %v8701, %v8834
  %v8992 = vadd.f32 %v8702, %v8837
  %v8993 = vadd.f32 %v8703, %v8840
  %v8994 = vadd.f32 %v8704, %v8843
  %v8995 = vadd.f32 %v8705, %v8846
  %v8996 = vadd.f32 %v8706, %v8849
  %v8997 = vadd.f32 %v8707, %v8852
  %v8998 = vadd.f32 %v8708, %v8855
  %v8999 = vadd.f32 %v8709, %v8858
  %v9000 = vadd.f32 %v8710, %v8861
  %v9001 = vadd.f32 %v8711, %v8864
  %v9002 = vadd.f32 %v8712, %v8867
  %v9003 = vadd.f32 %v8713, %v8870
  %v9004 = vadd.f32 %v8714, %v8873
  %v9005 = vadd.f32 %v8715, %v8876
  %v9006 = vadd.f32 %v8716, %v8879
  %v9007 = vadd.f32 %v8717, %v8882
  %v9008 = vadd.f32 %v8718, %v8885
  %v9009 = vadd.f32 %v8719, %v8888
  %v9010 = vadd.f32 %v8720, %v8891
  %v9011 = vadd.f32 %v8721, %v8894
  %v9012 = vadd.f32 %v8722, %v8897
  %v9013 = vadd.f32 %v8723, %v8900
  %v9014 = vadd.f32 %v8724, %v8903
  %v9015 = vadd.f32 %v8725, %v8906
  %v9016 = vadd.f32 %v8726, %v8909
  %v9017 = vadd.f32 %v8727, %v8912
  %v9018 = vadd.f32 %v8728, %v8915
  %v9019 = vadd.f32 %v8729, %v8918
  %v9020 = vadd.f32 %v8730, %v8921
  %v9021 = vadd.f32 %v8731, %v8924
  %v9022 = vadd.f32 %v8732, %v8927
  %v9023 = vadd.f32 %v8733, %v8930
  %v9024 = vadd.f32 %v8734, %v8933
  %v9025 = vadd.f32 %v8735, %v8936
  %v9026 = vadd.f32 %v8736, %v8939
  %v9027 = vadd.f32 %v8737, %v8942
  %v9028 = vadd.f32 %v8738, %v8945
  %v9029 = vadd.f32 %v8739, %v8948
  %v9030 = vadd.f32 %v8740, %v8951
  %v9031 = vadd.f32 %v8741, %v8954
  %v9032 = vadd.f32 %v8742, %v8957
  %v9033 = vadd.f32 %v8743, %v8960
  %v9034 = vadd.f32 %v8744, %v8963
  %v9035 = vadd.f32 %v8745, %v8966
  %v9036 = vadd.f32 %v8746, %v8969
  %v9037 = vadd.f32 %v8747, %v8972
  %s9038 = scalar_lea.vmem %s4, 1792
  %v9039 = vld [vmem:[%s9038] sm:$0xff]
  %v9040 = vld [vmem:[%s9038 + $0x8] sm:$0xff]
  %v9041 = vld [vmem:[%s9038 + $0x10] sm:$0xff]
  %v9042 = vld [vmem:[%s9038 + $0x18] sm:$0xff]
  %v9043 = vld [vmem:[%s9038 + $0x20] sm:$0xff]
  %v9044 = vld [vmem:[%s9038 + $0x28] sm:$0xff]
  %v9045 = vld [vmem:[%s9038 + $0x30] sm:$0xff]
  %v9046 = vld [vmem:[%s9038 + $0x38] sm:$0xff]
  %v9047 = vld [vmem:[%s9038 + $0x40] sm:$0xff]
  %v9048 = vld [vmem:[%s9038 + $0x48] sm:$0xff]
  %v9049 = vld [vmem:[%s9038 + $0x50] sm:$0xff]
  %v9050 = vld [vmem:[%s9038 + $0x58] sm:$0xff]
  %v9051 = vld [vmem:[%s9038 + $0x60] sm:$0xff]
  %v9052 = vld [vmem:[%s9038 + $0x68] sm:$0xff]
  %v9053 = vld [vmem:[%s9038 + $0x70] sm:$0xff]
  %v9054 = vld [vmem:[%s9038 + $0x78] sm:$0xff]
  %9055 = vmatpush.msra.mxu0 %v9054
  %9056 = vmatpush.msra.mxu0 %v9053
  %9057 = vmatpush.msra.mxu0 %v9052
  %9058 = vmatpush.msra.mxu0 %v9051
  %9059 = vmatpush.msra.mxu0 %v9050
  %9060 = vmatpush.msra.mxu0 %v9049
  %9061 = vmatpush.msra.mxu0 %v9048
  %9062 = vmatpush.msra.mxu0 %v9047
  %9063 = vmatpush.msra.mxu0 %v9046
  %9064 = vmatpush.msra.mxu0 %v9045
  %9065 = vmatpush.msra.mxu0 %v9044
  %9066 = vmatpush.msra.mxu0 %v9043
  %9067 = vmatpush.msra.mxu0 %v9042
  %9068 = vmatpush.msra.mxu0 %v9041
  %9069 = vmatpush.msra.mxu0 %v9040
  %9070 = vmatpush.msra.mxu0 %v9039
  %9071 = vmatmul.f32.gmra.mxu0 %v4991
  %v9072 = vpop.f32.mrf.mxu0
  %v9073 = vadd.f32 0.0, %v9072
  %9074 = vmatmul.f32.gmra.mxu0 %v4992
  %v9075 = vpop.f32.mrf.mxu0
  %v9076 = vadd.f32 0.0, %v9075
  %9077 = vmatmul.f32.gmra.mxu0 %v4993
  %v9078 = vpop.f32.mrf.mxu0
  %v9079 = vadd.f32 0.0, %v9078
  %9080 = vmatmul.f32.gmra.mxu0 %v4994
  %v9081 = vpop.f32.mrf.mxu0
  %v9082 = vadd.f32 0.0, %v9081
  %9083 = vmatmul.f32.gmra.mxu0 %v4995
  %v9084 = vpop.f32.mrf.mxu0
  %v9085 = vadd.f32 0.0, %v9084
  %9086 = vmatmul.f32.gmra.mxu0 %v4996
  %v9087 = vpop.f32.mrf.mxu0
  %v9088 = vadd.f32 0.0, %v9087
  %9089 = vmatmul.f32.gmra.mxu0 %v4997
  %v9090 = vpop.f32.mrf.mxu0
  %v9091 = vadd.f32 0.0, %v9090
  %9092 = vmatmul.f32.gmra.mxu0 %v4998
  %v9093 = vpop.f32.mrf.mxu0
  %v9094 = vadd.f32 0.0, %v9093
  %9095 = vmatmul.f32.gmra.mxu0 %v5003
  %v9096 = vpop.f32.mrf.mxu0
  %v9097 = vadd.f32 0.0, %v9096
  %9098 = vmatmul.f32.gmra.mxu0 %v5004
  %v9099 = vpop.f32.mrf.mxu0
  %v9100 = vadd.f32 0.0, %v9099
  %9101 = vmatmul.f32.gmra.mxu0 %v5005
  %v9102 = vpop.f32.mrf.mxu0
  %v9103 = vadd.f32 0.0, %v9102
  %9104 = vmatmul.f32.gmra.mxu0 %v5006
  %v9105 = vpop.f32.mrf.mxu0
  %v9106 = vadd.f32 0.0, %v9105
  %9107 = vmatmul.f32.gmra.mxu0 %v5007
  %v9108 = vpop.f32.mrf.mxu0
  %v9109 = vadd.f32 0.0, %v9108
  %9110 = vmatmul.f32.gmra.mxu0 %v5008
  %v9111 = vpop.f32.mrf.mxu0
  %v9112 = vadd.f32 0.0, %v9111
  %9113 = vmatmul.f32.gmra.mxu0 %v5009
  %v9114 = vpop.f32.mrf.mxu0
  %v9115 = vadd.f32 0.0, %v9114
  %9116 = vmatmul.f32.gmra.mxu0 %v5010
  %v9117 = vpop.f32.mrf.mxu0
  %v9118 = vadd.f32 0.0, %v9117
  %9119 = vmatmul.f32.gmra.mxu0 %v5015
  %v9120 = vpop.f32.mrf.mxu0
  %v9121 = vadd.f32 0.0, %v9120
  %9122 = vmatmul.f32.gmra.mxu0 %v5016
  %v9123 = vpop.f32.mrf.mxu0
  %v9124 = vadd.f32 0.0, %v9123
  %9125 = vmatmul.f32.gmra.mxu0 %v5017
  %v9126 = vpop.f32.mrf.mxu0
  %v9127 = vadd.f32 0.0, %v9126
  %9128 = vmatmul.f32.gmra.mxu0 %v5018
  %v9129 = vpop.f32.mrf.mxu0
  %v9130 = vadd.f32 0.0, %v9129
  %9131 = vmatmul.f32.gmra.mxu0 %v5019
  %v9132 = vpop.f32.mrf.mxu0
  %v9133 = vadd.f32 0.0, %v9132
  %9134 = vmatmul.f32.gmra.mxu0 %v5020
  %v9135 = vpop.f32.mrf.mxu0
  %v9136 = vadd.f32 0.0, %v9135
  %9137 = vmatmul.f32.gmra.mxu0 %v5021
  %v9138 = vpop.f32.mrf.mxu0
  %v9139 = vadd.f32 0.0, %v9138
  %9140 = vmatmul.f32.gmra.mxu0 %v5022
  %v9141 = vpop.f32.mrf.mxu0
  %v9142 = vadd.f32 0.0, %v9141
  %9143 = vmatmul.f32.gmra.mxu0 %v5027
  %v9144 = vpop.f32.mrf.mxu0
  %v9145 = vadd.f32 0.0, %v9144
  %9146 = vmatmul.f32.gmra.mxu0 %v5028
  %v9147 = vpop.f32.mrf.mxu0
  %v9148 = vadd.f32 0.0, %v9147
  %9149 = vmatmul.f32.gmra.mxu0 %v5029
  %v9150 = vpop.f32.mrf.mxu0
  %v9151 = vadd.f32 0.0, %v9150
  %9152 = vmatmul.f32.gmra.mxu0 %v5030
  %v9153 = vpop.f32.mrf.mxu0
  %v9154 = vadd.f32 0.0, %v9153
  %9155 = vmatmul.f32.gmra.mxu0 %v5031
  %v9156 = vpop.f32.mrf.mxu0
  %v9157 = vadd.f32 0.0, %v9156
  %9158 = vmatmul.f32.gmra.mxu0 %v5032
  %v9159 = vpop.f32.mrf.mxu0
  %v9160 = vadd.f32 0.0, %v9159
  %9161 = vmatmul.f32.gmra.mxu0 %v5033
  %v9162 = vpop.f32.mrf.mxu0
  %v9163 = vadd.f32 0.0, %v9162
  %9164 = vmatmul.f32.gmra.mxu0 %v5034
  %v9165 = vpop.f32.mrf.mxu0
  %v9166 = vadd.f32 0.0, %v9165
  %9167 = vmatmul.f32.gmra.mxu0 %v5039
  %v9168 = vpop.f32.mrf.mxu0
  %v9169 = vadd.f32 0.0, %v9168
  %9170 = vmatmul.f32.gmra.mxu0 %v5040
  %v9171 = vpop.f32.mrf.mxu0
  %v9172 = vadd.f32 0.0, %v9171
  %9173 = vmatmul.f32.gmra.mxu0 %v5041
  %v9174 = vpop.f32.mrf.mxu0
  %v9175 = vadd.f32 0.0, %v9174
  %9176 = vmatmul.f32.gmra.mxu0 %v5042
  %v9177 = vpop.f32.mrf.mxu0
  %v9178 = vadd.f32 0.0, %v9177
  %9179 = vmatmul.f32.gmra.mxu0 %v5043
  %v9180 = vpop.f32.mrf.mxu0
  %v9181 = vadd.f32 0.0, %v9180
  %9182 = vmatmul.f32.gmra.mxu0 %v5044
  %v9183 = vpop.f32.mrf.mxu0
  %v9184 = vadd.f32 0.0, %v9183
  %9185 = vmatmul.f32.gmra.mxu0 %v5045
  %v9186 = vpop.f32.mrf.mxu0
  %v9187 = vadd.f32 0.0, %v9186
  %9188 = vmatmul.f32.gmra.mxu0 %v5046
  %v9189 = vpop.f32.mrf.mxu0
  %v9190 = vadd.f32 0.0, %v9189
  %9191 = vmatmul.f32.gmra.mxu0 %v5051
  %v9192 = vpop.f32.mrf.mxu0
  %v9193 = vadd.f32 0.0, %v9192
  %9194 = vmatmul.f32.gmra.mxu0 %v5052
  %v9195 = vpop.f32.mrf.mxu0
  %v9196 = vadd.f32 0.0, %v9195
  %9197 = vmatmul.f32.gmra.mxu0 %v5053
  %v9198 = vpop.f32.mrf.mxu0
  %v9199 = vadd.f32 0.0, %v9198
  %9200 = vmatmul.f32.gmra.mxu0 %v5054
  %v9201 = vpop.f32.mrf.mxu0
  %v9202 = vadd.f32 0.0, %v9201
  %9203 = vmatmul.f32.gmra.mxu0 %v5055
  %v9204 = vpop.f32.mrf.mxu0
  %v9205 = vadd.f32 0.0, %v9204
  %9206 = vmatmul.f32.gmra.mxu0 %v5056
  %v9207 = vpop.f32.mrf.mxu0
  %v9208 = vadd.f32 0.0, %v9207
  %9209 = vmatmul.f32.gmra.mxu0 %v5057
  %v9210 = vpop.f32.mrf.mxu0
  %v9211 = vadd.f32 0.0, %v9210
  %9212 = vmatmul.f32.gmra.mxu0 %v5058
  %v9213 = vpop.f32.mrf.mxu0
  %v9214 = vadd.f32 0.0, %v9213
  %9215 = vmatmul.f32.gmra.mxu0 %v5063
  %v9216 = vpop.f32.mrf.mxu0
  %v9217 = vadd.f32 0.0, %v9216
  %9218 = vmatmul.f32.gmra.mxu0 %v5064
  %v9219 = vpop.f32.mrf.mxu0
  %v9220 = vadd.f32 0.0, %v9219
  %9221 = vmatmul.f32.gmra.mxu0 %v5065
  %v9222 = vpop.f32.mrf.mxu0
  %v9223 = vadd.f32 0.0, %v9222
  %9224 = vmatmul.f32.gmra.mxu0 %v5066
  %v9225 = vpop.f32.mrf.mxu0
  %v9226 = vadd.f32 0.0, %v9225
  %9227 = vmatmul.f32.gmra.mxu0 %v5067
  %v9228 = vpop.f32.mrf.mxu0
  %v9229 = vadd.f32 0.0, %v9228
  %9230 = vmatmul.f32.gmra.mxu0 %v5068
  %v9231 = vpop.f32.mrf.mxu0
  %v9232 = vadd.f32 0.0, %v9231
  %9233 = vmatmul.f32.gmra.mxu0 %v5069
  %v9234 = vpop.f32.mrf.mxu0
  %v9235 = vadd.f32 0.0, %v9234
  %9236 = vmatmul.f32.gmra.mxu0 %v5070
  %v9237 = vpop.f32.mrf.mxu0
  %v9238 = vadd.f32 0.0, %v9237
  %9239 = vmatmul.f32.gmra.mxu0 %v5075
  %v9240 = vpop.f32.mrf.mxu0
  %v9241 = vadd.f32 0.0, %v9240
  %9242 = vmatmul.f32.gmra.mxu0 %v5076
  %v9243 = vpop.f32.mrf.mxu0
  %v9244 = vadd.f32 0.0, %v9243
  %9245 = vmatmul.f32.gmra.mxu0 %v5077
  %v9246 = vpop.f32.mrf.mxu0
  %v9247 = vadd.f32 0.0, %v9246
  %9248 = vmatmul.f32.gmra.mxu0 %v5078
  %v9249 = vpop.f32.mrf.mxu0
  %v9250 = vadd.f32 0.0, %v9249
  %9251 = vmatmul.f32.gmra.mxu0 %v5079
  %v9252 = vpop.f32.mrf.mxu0
  %v9253 = vadd.f32 0.0, %v9252
  %9254 = vmatmul.f32.gmra.mxu0 %v5080
  %v9255 = vpop.f32.mrf.mxu0
  %v9256 = vadd.f32 0.0, %v9255
  %9257 = vmatmul.f32.gmra.mxu0 %v5081
  %v9258 = vpop.f32.mrf.mxu0
  %v9259 = vadd.f32 0.0, %v9258
  %9260 = vmatmul.f32.gmra.mxu0 %v5082
  %v9261 = vpop.f32.mrf.mxu0
  %v9262 = vadd.f32 0.0, %v9261
  %9263 = vdwg.mxu0
  %v9264 = vadd.f32 %v8974, %v9073
  %v9265 = vadd.f32 %v8975, %v9076
  %v9266 = vadd.f32 %v8976, %v9079
  %v9267 = vadd.f32 %v8977, %v9082
  %v9268 = vadd.f32 %v8978, %v9085
  %v9269 = vadd.f32 %v8979, %v9088
  %v9270 = vadd.f32 %v8980, %v9091
  %v9271 = vadd.f32 %v8981, %v9094
  %v9272 = vadd.f32 %v8982, %v9097
  %v9273 = vadd.f32 %v8983, %v9100
  %v9274 = vadd.f32 %v8984, %v9103
  %v9275 = vadd.f32 %v8985, %v9106
  %v9276 = vadd.f32 %v8986, %v9109
  %v9277 = vadd.f32 %v8987, %v9112
  %v9278 = vadd.f32 %v8988, %v9115
  %v9279 = vadd.f32 %v8989, %v9118
  %v9280 = vadd.f32 %v8990, %v9121
  %v9281 = vadd.f32 %v8991, %v9124
  %v9282 = vadd.f32 %v8992, %v9127
  %v9283 = vadd.f32 %v8993, %v9130
  %v9284 = vadd.f32 %v8994, %v9133
  %v9285 = vadd.f32 %v8995, %v9136
  %v9286 = vadd.f32 %v8996, %v9139
  %v9287 = vadd.f32 %v8997, %v9142
  %v9288 = vadd.f32 %v8998, %v9145
  %v9289 = vadd.f32 %v8999, %v9148
  %v9290 = vadd.f32 %v9000, %v9151
  %v9291 = vadd.f32 %v9001, %v9154
  %v9292 = vadd.f32 %v9002, %v9157
  %v9293 = vadd.f32 %v9003, %v9160
  %v9294 = vadd.f32 %v9004, %v9163
  %v9295 = vadd.f32 %v9005, %v9166
  %v9296 = vadd.f32 %v9006, %v9169
  %v9297 = vadd.f32 %v9007, %v9172
  %v9298 = vadd.f32 %v9008, %v9175
  %v9299 = vadd.f32 %v9009, %v9178
  %v9300 = vadd.f32 %v9010, %v9181
  %v9301 = vadd.f32 %v9011, %v9184
  %v9302 = vadd.f32 %v9012, %v9187
  %v9303 = vadd.f32 %v9013, %v9190
  %v9304 = vadd.f32 %v9014, %v9193
  %v9305 = vadd.f32 %v9015, %v9196
  %v9306 = vadd.f32 %v9016, %v9199
  %v9307 = vadd.f32 %v9017, %v9202
  %v9308 = vadd.f32 %v9018, %v9205
  %v9309 = vadd.f32 %v9019, %v9208
  %v9310 = vadd.f32 %v9020, %v9211
  %v9311 = vadd.f32 %v9021, %v9214
  %v9312 = vadd.f32 %v9022, %v9217
  %v9313 = vadd.f32 %v9023, %v9220
  %v9314 = vadd.f32 %v9024, %v9223
  %v9315 = vadd.f32 %v9025, %v9226
  %v9316 = vadd.f32 %v9026, %v9229
  %v9317 = vadd.f32 %v9027, %v9232
  %v9318 = vadd.f32 %v9028, %v9235
  %v9319 = vadd.f32 %v9029, %v9238
  %v9320 = vadd.f32 %v9030, %v9241
  %v9321 = vadd.f32 %v9031, %v9244
  %v9322 = vadd.f32 %v9032, %v9247
  %v9323 = vadd.f32 %v9033, %v9250
  %v9324 = vadd.f32 %v9034, %v9253
  %v9325 = vadd.f32 %v9035, %v9256
  %v9326 = vadd.f32 %v9036, %v9259
  %v9327 = vadd.f32 %v9037, %v9262
  %s9328 = scalar_lea.vmem %s4, 1920
  %v9329 = vld [vmem:[%s9328] sm:$0xff]
  %v9330 = vld [vmem:[%s9328 + $0x8] sm:$0xff]
  %v9331 = vld [vmem:[%s9328 + $0x10] sm:$0xff]
  %v9332 = vld [vmem:[%s9328 + $0x18] sm:$0xff]
  %v9333 = vld [vmem:[%s9328 + $0x20] sm:$0xff]
  %v9334 = vld [vmem:[%s9328 + $0x28] sm:$0xff]
  %v9335 = vld [vmem:[%s9328 + $0x30] sm:$0xff]
  %v9336 = vld [vmem:[%s9328 + $0x38] sm:$0xff]
  %v9337 = vld [vmem:[%s9328 + $0x40] sm:$0xff]
  %v9338 = vld [vmem:[%s9328 + $0x48] sm:$0xff]
  %v9339 = vld [vmem:[%s9328 + $0x50] sm:$0xff]
  %v9340 = vld [vmem:[%s9328 + $0x58] sm:$0xff]
  %v9341 = vld [vmem:[%s9328 + $0x60] sm:$0xff]
  %v9342 = vld [vmem:[%s9328 + $0x68] sm:$0xff]
  %v9343 = vld [vmem:[%s9328 + $0x70] sm:$0xff]
  %v9344 = vld [vmem:[%s9328 + $0x78] sm:$0xff]
  %9345 = vmatpush.msra.mxu0 %v9344
  %9346 = vmatpush.msra.mxu0 %v9343
  %9347 = vmatpush.msra.mxu0 %v9342
  %9348 = vmatpush.msra.mxu0 %v9341
  %9349 = vmatpush.msra.mxu0 %v9340
  %9350 = vmatpush.msra.mxu0 %v9339
  %9351 = vmatpush.msra.mxu0 %v9338
  %9352 = vmatpush.msra.mxu0 %v9337
  %9353 = vmatpush.msra.mxu0 %v9336
  %9354 = vmatpush.msra.mxu0 %v9335
  %9355 = vmatpush.msra.mxu0 %v9334
  %9356 = vmatpush.msra.mxu0 %v9333
  %9357 = vmatpush.msra.mxu0 %v9332
  %9358 = vmatpush.msra.mxu0 %v9331
  %9359 = vmatpush.msra.mxu0 %v9330
  %9360 = vmatpush.msra.mxu0 %v9329
  %9361 = vmatmul.f32.gmra.mxu0 %v4999
  %v9362 = vpop.f32.mrf.mxu0
  %v9363 = vadd.f32 0.0, %v9362
  %9364 = vmatmul.f32.gmra.mxu0 %v5000
  %v9365 = vpop.f32.mrf.mxu0
  %v9366 = vadd.f32 0.0, %v9365
  %9367 = vmatmul.f32.gmra.mxu0 %v5001
  %v9368 = vpop.f32.mrf.mxu0
  %v9369 = vadd.f32 0.0, %v9368
  %9370 = vmatmul.f32.gmra.mxu0 %v5002
  %v9371 = vpop.f32.mrf.mxu0
  %v9372 = vadd.f32 0.0, %v9371
  %9373 = vmatmul.f32.gmra.mxu0 %v5003
  %v9374 = vpop.f32.mrf.mxu0
  %v9375 = vadd.f32 0.0, %v9374
  %9376 = vmatmul.f32.gmra.mxu0 %v5004
  %v9377 = vpop.f32.mrf.mxu0
  %v9378 = vadd.f32 0.0, %v9377
  %9379 = vmatmul.f32.gmra.mxu0 %v5005
  %v9380 = vpop.f32.mrf.mxu0
  %v9381 = vadd.f32 0.0, %v9380
  %9382 = vmatmul.f32.gmra.mxu0 %v5006
  %v9383 = vpop.f32.mrf.mxu0
  %v9384 = vadd.f32 0.0, %v9383
  %9385 = vmatmul.f32.gmra.mxu0 %v5011
  %v9386 = vpop.f32.mrf.mxu0
  %v9387 = vadd.f32 0.0, %v9386
  %9388 = vmatmul.f32.gmra.mxu0 %v5012
  %v9389 = vpop.f32.mrf.mxu0
  %v9390 = vadd.f32 0.0, %v9389
  %9391 = vmatmul.f32.gmra.mxu0 %v5013
  %v9392 = vpop.f32.mrf.mxu0
  %v9393 = vadd.f32 0.0, %v9392
  %9394 = vmatmul.f32.gmra.mxu0 %v5014
  %v9395 = vpop.f32.mrf.mxu0
  %v9396 = vadd.f32 0.0, %v9395
  %9397 = vmatmul.f32.gmra.mxu0 %v5015
  %v9398 = vpop.f32.mrf.mxu0
  %v9399 = vadd.f32 0.0, %v9398
  %9400 = vmatmul.f32.gmra.mxu0 %v5016
  %v9401 = vpop.f32.mrf.mxu0
  %v9402 = vadd.f32 0.0, %v9401
  %9403 = vmatmul.f32.gmra.mxu0 %v5017
  %v9404 = vpop.f32.mrf.mxu0
  %v9405 = vadd.f32 0.0, %v9404
  %9406 = vmatmul.f32.gmra.mxu0 %v5018
  %v9407 = vpop.f32.mrf.mxu0
  %v9408 = vadd.f32 0.0, %v9407
  %9409 = vmatmul.f32.gmra.mxu0 %v5023
  %v9410 = vpop.f32.mrf.mxu0
  %v9411 = vadd.f32 0.0, %v9410
  %9412 = vmatmul.f32.gmra.mxu0 %v5024
  %v9413 = vpop.f32.mrf.mxu0
  %v9414 = vadd.f32 0.0, %v9413
  %9415 = vmatmul.f32.gmra.mxu0 %v5025
  %v9416 = vpop.f32.mrf.mxu0
  %v9417 = vadd.f32 0.0, %v9416
  %9418 = vmatmul.f32.gmra.mxu0 %v5026
  %v9419 = vpop.f32.mrf.mxu0
  %v9420 = vadd.f32 0.0, %v9419
  %9421 = vmatmul.f32.gmra.mxu0 %v5027
  %v9422 = vpop.f32.mrf.mxu0
  %v9423 = vadd.f32 0.0, %v9422
  %9424 = vmatmul.f32.gmra.mxu0 %v5028
  %v9425 = vpop.f32.mrf.mxu0
  %v9426 = vadd.f32 0.0, %v9425
  %9427 = vmatmul.f32.gmra.mxu0 %v5029
  %v9428 = vpop.f32.mrf.mxu0
  %v9429 = vadd.f32 0.0, %v9428
  %9430 = vmatmul.f32.gmra.mxu0 %v5030
  %v9431 = vpop.f32.mrf.mxu0
  %v9432 = vadd.f32 0.0, %v9431
  %9433 = vmatmul.f32.gmra.mxu0 %v5035
  %v9434 = vpop.f32.mrf.mxu0
  %v9435 = vadd.f32 0.0, %v9434
  %9436 = vmatmul.f32.gmra.mxu0 %v5036
  %v9437 = vpop.f32.mrf.mxu0
  %v9438 = vadd.f32 0.0, %v9437
  %9439 = vmatmul.f32.gmra.mxu0 %v5037
  %v9440 = vpop.f32.mrf.mxu0
  %v9441 = vadd.f32 0.0, %v9440
  %9442 = vmatmul.f32.gmra.mxu0 %v5038
  %v9443 = vpop.f32.mrf.mxu0
  %v9444 = vadd.f32 0.0, %v9443
  %9445 = vmatmul.f32.gmra.mxu0 %v5039
  %v9446 = vpop.f32.mrf.mxu0
  %v9447 = vadd.f32 0.0, %v9446
  %9448 = vmatmul.f32.gmra.mxu0 %v5040
  %v9449 = vpop.f32.mrf.mxu0
  %v9450 = vadd.f32 0.0, %v9449
  %9451 = vmatmul.f32.gmra.mxu0 %v5041
  %v9452 = vpop.f32.mrf.mxu0
  %v9453 = vadd.f32 0.0, %v9452
  %9454 = vmatmul.f32.gmra.mxu0 %v5042
  %v9455 = vpop.f32.mrf.mxu0
  %v9456 = vadd.f32 0.0, %v9455
  %9457 = vmatmul.f32.gmra.mxu0 %v5047
  %v9458 = vpop.f32.mrf.mxu0
  %v9459 = vadd.f32 0.0, %v9458
  %9460 = vmatmul.f32.gmra.mxu0 %v5048
  %v9461 = vpop.f32.mrf.mxu0
  %v9462 = vadd.f32 0.0, %v9461
  %9463 = vmatmul.f32.gmra.mxu0 %v5049
  %v9464 = vpop.f32.mrf.mxu0
  %v9465 = vadd.f32 0.0, %v9464
  %9466 = vmatmul.f32.gmra.mxu0 %v5050
  %v9467 = vpop.f32.mrf.mxu0
  %v9468 = vadd.f32 0.0, %v9467
  %9469 = vmatmul.f32.gmra.mxu0 %v5051
  %v9470 = vpop.f32.mrf.mxu0
  %v9471 = vadd.f32 0.0, %v9470
  %9472 = vmatmul.f32.gmra.mxu0 %v5052
  %v9473 = vpop.f32.mrf.mxu0
  %v9474 = vadd.f32 0.0, %v9473
  %9475 = vmatmul.f32.gmra.mxu0 %v5053
  %v9476 = vpop.f32.mrf.mxu0
  %v9477 = vadd.f32 0.0, %v9476
  %9478 = vmatmul.f32.gmra.mxu0 %v5054
  %v9479 = vpop.f32.mrf.mxu0
  %v9480 = vadd.f32 0.0, %v9479
  %9481 = vmatmul.f32.gmra.mxu0 %v5059
  %v9482 = vpop.f32.mrf.mxu0
  %v9483 = vadd.f32 0.0, %v9482
  %9484 = vmatmul.f32.gmra.mxu0 %v5060
  %v9485 = vpop.f32.mrf.mxu0
  %v9486 = vadd.f32 0.0, %v9485
  %9487 = vmatmul.f32.gmra.mxu0 %v5061
  %v9488 = vpop.f32.mrf.mxu0
  %v9489 = vadd.f32 0.0, %v9488
  %9490 = vmatmul.f32.gmra.mxu0 %v5062
  %v9491 = vpop.f32.mrf.mxu0
  %v9492 = vadd.f32 0.0, %v9491
  %9493 = vmatmul.f32.gmra.mxu0 %v5063
  %v9494 = vpop.f32.mrf.mxu0
  %v9495 = vadd.f32 0.0, %v9494
  %9496 = vmatmul.f32.gmra.mxu0 %v5064
  %v9497 = vpop.f32.mrf.mxu0
  %v9498 = vadd.f32 0.0, %v9497
  %9499 = vmatmul.f32.gmra.mxu0 %v5065
  %v9500 = vpop.f32.mrf.mxu0
  %v9501 = vadd.f32 0.0, %v9500
  %9502 = vmatmul.f32.gmra.mxu0 %v5066
  %v9503 = vpop.f32.mrf.mxu0
  %v9504 = vadd.f32 0.0, %v9503
  %9505 = vmatmul.f32.gmra.mxu0 %v5071
  %v9506 = vpop.f32.mrf.mxu0
  %v9507 = vadd.f32 0.0, %v9506
  %9508 = vmatmul.f32.gmra.mxu0 %v5072
  %v9509 = vpop.f32.mrf.mxu0
  %v9510 = vadd.f32 0.0, %v9509
  %9511 = vmatmul.f32.gmra.mxu0 %v5073
  %v9512 = vpop.f32.mrf.mxu0
  %v9513 = vadd.f32 0.0, %v9512
  %9514 = vmatmul.f32.gmra.mxu0 %v5074
  %v9515 = vpop.f32.mrf.mxu0
  %v9516 = vadd.f32 0.0, %v9515
  %9517 = vmatmul.f32.gmra.mxu0 %v5075
  %v9518 = vpop.f32.mrf.mxu0
  %v9519 = vadd.f32 0.0, %v9518
  %9520 = vmatmul.f32.gmra.mxu0 %v5076
  %v9521 = vpop.f32.mrf.mxu0
  %v9522 = vadd.f32 0.0, %v9521
  %9523 = vmatmul.f32.gmra.mxu0 %v5077
  %v9524 = vpop.f32.mrf.mxu0
  %v9525 = vadd.f32 0.0, %v9524
  %9526 = vmatmul.f32.gmra.mxu0 %v5078
  %v9527 = vpop.f32.mrf.mxu0
  %v9528 = vadd.f32 0.0, %v9527
  %9529 = vmatmul.f32.gmra.mxu0 %v5083
  %v9530 = vpop.f32.mrf.mxu0
  %v9531 = vadd.f32 0.0, %v9530
  %9532 = vmatmul.f32.gmra.mxu0 %v5084
  %v9533 = vpop.f32.mrf.mxu0
  %v9534 = vadd.f32 0.0, %v9533
  %9535 = vmatmul.f32.gmra.mxu0 %v5085
  %v9536 = vpop.f32.mrf.mxu0
  %v9537 = vadd.f32 0.0, %v9536
  %9538 = vmatmul.f32.gmra.mxu0 %v5086
  %v9539 = vpop.f32.mrf.mxu0
  %v9540 = vadd.f32 0.0, %v9539
  %9541 = vmatmul.f32.gmra.mxu0 %v5087
  %v9542 = vpop.f32.mrf.mxu0
  %v9543 = vadd.f32 0.0, %v9542
  %9544 = vmatmul.f32.gmra.mxu0 %v5088
  %v9545 = vpop.f32.mrf.mxu0
  %v9546 = vadd.f32 0.0, %v9545
  %9547 = vmatmul.f32.gmra.mxu0 %v5089
  %v9548 = vpop.f32.mrf.mxu0
  %v9549 = vadd.f32 0.0, %v9548
  %9550 = vmatmul.f32.gmra.mxu0 %v5090
  %v9551 = vpop.f32.mrf.mxu0
  %v9552 = vadd.f32 0.0, %v9551
  %9553 = vdwg.mxu0
  %v9554 = vadd.f32 %v9264, %v9363
  %v9555 = vadd.f32 %v9265, %v9366
  %v9556 = vadd.f32 %v9266, %v9369
  %v9557 = vadd.f32 %v9267, %v9372
  %v9558 = vadd.f32 %v9268, %v9375
  %v9559 = vadd.f32 %v9269, %v9378
  %v9560 = vadd.f32 %v9270, %v9381
  %v9561 = vadd.f32 %v9271, %v9384
  %v9562 = vadd.f32 %v9272, %v9387
  %v9563 = vadd.f32 %v9273, %v9390
  %v9564 = vadd.f32 %v9274, %v9393
  %v9565 = vadd.f32 %v9275, %v9396
  %v9566 = vadd.f32 %v9276, %v9399
  %v9567 = vadd.f32 %v9277, %v9402
  %v9568 = vadd.f32 %v9278, %v9405
  %v9569 = vadd.f32 %v9279, %v9408
  %v9570 = vadd.f32 %v9280, %v9411
  %v9571 = vadd.f32 %v9281, %v9414
  %v9572 = vadd.f32 %v9282, %v9417
  %v9573 = vadd.f32 %v9283, %v9420
  %v9574 = vadd.f32 %v9284, %v9423
  %v9575 = vadd.f32 %v9285, %v9426
  %v9576 = vadd.f32 %v9286, %v9429
  %v9577 = vadd.f32 %v9287, %v9432
  %v9578 = vadd.f32 %v9288, %v9435
  %v9579 = vadd.f32 %v9289, %v9438
  %v9580 = vadd.f32 %v9290, %v9441
  %v9581 = vadd.f32 %v9291, %v9444
  %v9582 = vadd.f32 %v9292, %v9447
  %v9583 = vadd.f32 %v9293, %v9450
  %v9584 = vadd.f32 %v9294, %v9453
  %v9585 = vadd.f32 %v9295, %v9456
  %v9586 = vadd.f32 %v9296, %v9459
  %v9587 = vadd.f32 %v9297, %v9462
  %v9588 = vadd.f32 %v9298, %v9465
  %v9589 = vadd.f32 %v9299, %v9468
  %v9590 = vadd.f32 %v9300, %v9471
  %v9591 = vadd.f32 %v9301, %v9474
  %v9592 = vadd.f32 %v9302, %v9477
  %v9593 = vadd.f32 %v9303, %v9480
  %v9594 = vadd.f32 %v9304, %v9483
  %v9595 = vadd.f32 %v9305, %v9486
  %v9596 = vadd.f32 %v9306, %v9489
  %v9597 = vadd.f32 %v9307, %v9492
  %v9598 = vadd.f32 %v9308, %v9495
  %v9599 = vadd.f32 %v9309, %v9498
  %v9600 = vadd.f32 %v9310, %v9501
  %v9601 = vadd.f32 %v9311, %v9504
  %v9602 = vadd.f32 %v9312, %v9507
  %v9603 = vadd.f32 %v9313, %v9510
  %v9604 = vadd.f32 %v9314, %v9513
  %v9605 = vadd.f32 %v9315, %v9516
  %v9606 = vadd.f32 %v9316, %v9519
  %v9607 = vadd.f32 %v9317, %v9522
  %v9608 = vadd.f32 %v9318, %v9525
  %v9609 = vadd.f32 %v9319, %v9528
  %v9610 = vadd.f32 %v9320, %v9531
  %v9611 = vadd.f32 %v9321, %v9534
  %v9612 = vadd.f32 %v9322, %v9537
  %v9613 = vadd.f32 %v9323, %v9540
  %v9614 = vadd.f32 %v9324, %v9543
  %v9615 = vadd.f32 %v9325, %v9546
  %v9616 = vadd.f32 %v9326, %v9549
  %v9617 = vadd.f32 %v9327, %v9552
  %s9618 = scalar_lea.vmem %s4, 2048
  %v9619 = vld [vmem:[%s9618] sm:$0xff]
  %v9620 = vld [vmem:[%s9618 + $0x8] sm:$0xff]
  %v9621 = vld [vmem:[%s9618 + $0x10] sm:$0xff]
  %v9622 = vld [vmem:[%s9618 + $0x18] sm:$0xff]
  %v9623 = vld [vmem:[%s9618 + $0x20] sm:$0xff]
  %v9624 = vld [vmem:[%s9618 + $0x28] sm:$0xff]
  %v9625 = vld [vmem:[%s9618 + $0x30] sm:$0xff]
  %v9626 = vld [vmem:[%s9618 + $0x38] sm:$0xff]
  %v9627 = vld [vmem:[%s9618 + $0x40] sm:$0xff]
  %v9628 = vld [vmem:[%s9618 + $0x48] sm:$0xff]
  %v9629 = vld [vmem:[%s9618 + $0x50] sm:$0xff]
  %v9630 = vld [vmem:[%s9618 + $0x58] sm:$0xff]
  %v9631 = vld [vmem:[%s9618 + $0x60] sm:$0xff]
  %v9632 = vld [vmem:[%s9618 + $0x68] sm:$0xff]
  %v9633 = vld [vmem:[%s9618 + $0x70] sm:$0xff]
  %v9634 = vld [vmem:[%s9618 + $0x78] sm:$0xff]
  %9635 = vmatpush.msra.mxu0 %v9634
  %9636 = vmatpush.msra.mxu0 %v9633
  %9637 = vmatpush.msra.mxu0 %v9632
  %9638 = vmatpush.msra.mxu0 %v9631
  %9639 = vmatpush.msra.mxu0 %v9630
  %9640 = vmatpush.msra.mxu0 %v9629
  %9641 = vmatpush.msra.mxu0 %v9628
  %9642 = vmatpush.msra.mxu0 %v9627
  %9643 = vmatpush.msra.mxu0 %v9626
  %9644 = vmatpush.msra.mxu0 %v9625
  %9645 = vmatpush.msra.mxu0 %v9624
  %9646 = vmatpush.msra.mxu0 %v9623
  %9647 = vmatpush.msra.mxu0 %v9622
  %9648 = vmatpush.msra.mxu0 %v9621
  %9649 = vmatpush.msra.mxu0 %v9620
  %9650 = vmatpush.msra.mxu0 %v9619
  %9651 = vmatmul.f32.gmra.mxu0 %v5000
  %v9652 = vpop.f32.mrf.mxu0
  %v9653 = vadd.f32 0.0, %v9652
  %9654 = vmatmul.f32.gmra.mxu0 %v5001
  %v9655 = vpop.f32.mrf.mxu0
  %v9656 = vadd.f32 0.0, %v9655
  %9657 = vmatmul.f32.gmra.mxu0 %v5002
  %v9658 = vpop.f32.mrf.mxu0
  %v9659 = vadd.f32 0.0, %v9658
  %9660 = vmatmul.f32.gmra.mxu0 %v5003
  %v9661 = vpop.f32.mrf.mxu0
  %v9662 = vadd.f32 0.0, %v9661
  %9663 = vmatmul.f32.gmra.mxu0 %v5004
  %v9664 = vpop.f32.mrf.mxu0
  %v9665 = vadd.f32 0.0, %v9664
  %9666 = vmatmul.f32.gmra.mxu0 %v5005
  %v9667 = vpop.f32.mrf.mxu0
  %v9668 = vadd.f32 0.0, %v9667
  %9669 = vmatmul.f32.gmra.mxu0 %v5006
  %v9670 = vpop.f32.mrf.mxu0
  %v9671 = vadd.f32 0.0, %v9670
  %9672 = vmatmul.f32.gmra.mxu0 %v5007
  %v9673 = vpop.f32.mrf.mxu0
  %v9674 = vadd.f32 0.0, %v9673
  %9675 = vmatmul.f32.gmra.mxu0 %v5012
  %v9676 = vpop.f32.mrf.mxu0
  %v9677 = vadd.f32 0.0, %v9676
  %9678 = vmatmul.f32.gmra.mxu0 %v5013
  %v9679 = vpop.f32.mrf.mxu0
  %v9680 = vadd.f32 0.0, %v9679
  %9681 = vmatmul.f32.gmra.mxu0 %v5014
  %v9682 = vpop.f32.mrf.mxu0
  %v9683 = vadd.f32 0.0, %v9682
  %9684 = vmatmul.f32.gmra.mxu0 %v5015
  %v9685 = vpop.f32.mrf.mxu0
  %v9686 = vadd.f32 0.0, %v9685
  %9687 = vmatmul.f32.gmra.mxu0 %v5016
  %v9688 = vpop.f32.mrf.mxu0
  %v9689 = vadd.f32 0.0, %v9688
  %9690 = vmatmul.f32.gmra.mxu0 %v5017
  %v9691 = vpop.f32.mrf.mxu0
  %v9692 = vadd.f32 0.0, %v9691
  %9693 = vmatmul.f32.gmra.mxu0 %v5018
  %v9694 = vpop.f32.mrf.mxu0
  %v9695 = vadd.f32 0.0, %v9694
  %9696 = vmatmul.f32.gmra.mxu0 %v5019
  %v9697 = vpop.f32.mrf.mxu0
  %v9698 = vadd.f32 0.0, %v9697
  %9699 = vmatmul.f32.gmra.mxu0 %v5024
  %v9700 = vpop.f32.mrf.mxu0
  %v9701 = vadd.f32 0.0, %v9700
  %9702 = vmatmul.f32.gmra.mxu0 %v5025
  %v9703 = vpop.f32.mrf.mxu0
  %v9704 = vadd.f32 0.0, %v9703
  %9705 = vmatmul.f32.gmra.mxu0 %v5026
  %v9706 = vpop.f32.mrf.mxu0
  %v9707 = vadd.f32 0.0, %v9706
  %9708 = vmatmul.f32.gmra.mxu0 %v5027
  %v9709 = vpop.f32.mrf.mxu0
  %v9710 = vadd.f32 0.0, %v9709
  %9711 = vmatmul.f32.gmra.mxu0 %v5028
  %v9712 = vpop.f32.mrf.mxu0
  %v9713 = vadd.f32 0.0, %v9712
  %9714 = vmatmul.f32.gmra.mxu0 %v5029
  %v9715 = vpop.f32.mrf.mxu0
  %v9716 = vadd.f32 0.0, %v9715
  %9717 = vmatmul.f32.gmra.mxu0 %v5030
  %v9718 = vpop.f32.mrf.mxu0
  %v9719 = vadd.f32 0.0, %v9718
  %9720 = vmatmul.f32.gmra.mxu0 %v5031
  %v9721 = vpop.f32.mrf.mxu0
  %v9722 = vadd.f32 0.0, %v9721
  %9723 = vmatmul.f32.gmra.mxu0 %v5036
  %v9724 = vpop.f32.mrf.mxu0
  %v9725 = vadd.f32 0.0, %v9724
  %9726 = vmatmul.f32.gmra.mxu0 %v5037
  %v9727 = vpop.f32.mrf.mxu0
  %v9728 = vadd.f32 0.0, %v9727
  %9729 = vmatmul.f32.gmra.mxu0 %v5038
  %v9730 = vpop.f32.mrf.mxu0
  %v9731 = vadd.f32 0.0, %v9730
  %9732 = vmatmul.f32.gmra.mxu0 %v5039
  %v9733 = vpop.f32.mrf.mxu0
  %v9734 = vadd.f32 0.0, %v9733
  %9735 = vmatmul.f32.gmra.mxu0 %v5040
  %v9736 = vpop.f32.mrf.mxu0
  %v9737 = vadd.f32 0.0, %v9736
  %9738 = vmatmul.f32.gmra.mxu0 %v5041
  %v9739 = vpop.f32.mrf.mxu0
  %v9740 = vadd.f32 0.0, %v9739
  %9741 = vmatmul.f32.gmra.mxu0 %v5042
  %v9742 = vpop.f32.mrf.mxu0
  %v9743 = vadd.f32 0.0, %v9742
  %9744 = vmatmul.f32.gmra.mxu0 %v5043
  %v9745 = vpop.f32.mrf.mxu0
  %v9746 = vadd.f32 0.0, %v9745
  %9747 = vmatmul.f32.gmra.mxu0 %v5048
  %v9748 = vpop.f32.mrf.mxu0
  %v9749 = vadd.f32 0.0, %v9748
  %9750 = vmatmul.f32.gmra.mxu0 %v5049
  %v9751 = vpop.f32.mrf.mxu0
  %v9752 = vadd.f32 0.0, %v9751
  %9753 = vmatmul.f32.gmra.mxu0 %v5050
  %v9754 = vpop.f32.mrf.mxu0
  %v9755 = vadd.f32 0.0, %v9754
  %9756 = vmatmul.f32.gmra.mxu0 %v5051
  %v9757 = vpop.f32.mrf.mxu0
  %v9758 = vadd.f32 0.0, %v9757
  %9759 = vmatmul.f32.gmra.mxu0 %v5052
  %v9760 = vpop.f32.mrf.mxu0
  %v9761 = vadd.f32 0.0, %v9760
  %9762 = vmatmul.f32.gmra.mxu0 %v5053
  %v9763 = vpop.f32.mrf.mxu0
  %v9764 = vadd.f32 0.0, %v9763
  %9765 = vmatmul.f32.gmra.mxu0 %v5054
  %v9766 = vpop.f32.mrf.mxu0
  %v9767 = vadd.f32 0.0, %v9766
  %9768 = vmatmul.f32.gmra.mxu0 %v5055
  %v9769 = vpop.f32.mrf.mxu0
  %v9770 = vadd.f32 0.0, %v9769
  %9771 = vmatmul.f32.gmra.mxu0 %v5060
  %v9772 = vpop.f32.mrf.mxu0
  %v9773 = vadd.f32 0.0, %v9772
  %9774 = vmatmul.f32.gmra.mxu0 %v5061
  %v9775 = vpop.f32.mrf.mxu0
  %v9776 = vadd.f32 0.0, %v9775
  %9777 = vmatmul.f32.gmra.mxu0 %v5062
  %v9778 = vpop.f32.mrf.mxu0
  %v9779 = vadd.f32 0.0, %v9778
  %9780 = vmatmul.f32.gmra.mxu0 %v5063
  %v9781 = vpop.f32.mrf.mxu0
  %v9782 = vadd.f32 0.0, %v9781
  %9783 = vmatmul.f32.gmra.mxu0 %v5064
  %v9784 = vpop.f32.mrf.mxu0
  %v9785 = vadd.f32 0.0, %v9784
  %9786 = vmatmul.f32.gmra.mxu0 %v5065
  %v9787 = vpop.f32.mrf.mxu0
  %v9788 = vadd.f32 0.0, %v9787
  %9789 = vmatmul.f32.gmra.mxu0 %v5066
  %v9790 = vpop.f32.mrf.mxu0
  %v9791 = vadd.f32 0.0, %v9790
  %9792 = vmatmul.f32.gmra.mxu0 %v5067
  %v9793 = vpop.f32.mrf.mxu0
  %v9794 = vadd.f32 0.0, %v9793
  %9795 = vmatmul.f32.gmra.mxu0 %v5072
  %v9796 = vpop.f32.mrf.mxu0
  %v9797 = vadd.f32 0.0, %v9796
  %9798 = vmatmul.f32.gmra.mxu0 %v5073
  %v9799 = vpop.f32.mrf.mxu0
  %v9800 = vadd.f32 0.0, %v9799
  %9801 = vmatmul.f32.gmra.mxu0 %v5074
  %v9802 = vpop.f32.mrf.mxu0
  %v9803 = vadd.f32 0.0, %v9802
  %9804 = vmatmul.f32.gmra.mxu0 %v5075
  %v9805 = vpop.f32.mrf.mxu0
  %v9806 = vadd.f32 0.0, %v9805
  %9807 = vmatmul.f32.gmra.mxu0 %v5076
  %v9808 = vpop.f32.mrf.mxu0
  %v9809 = vadd.f32 0.0, %v9808
  %9810 = vmatmul.f32.gmra.mxu0 %v5077
  %v9811 = vpop.f32.mrf.mxu0
  %v9812 = vadd.f32 0.0, %v9811
  %9813 = vmatmul.f32.gmra.mxu0 %v5078
  %v9814 = vpop.f32.mrf.mxu0
  %v9815 = vadd.f32 0.0, %v9814
  %9816 = vmatmul.f32.gmra.mxu0 %v5079
  %v9817 = vpop.f32.mrf.mxu0
  %v9818 = vadd.f32 0.0, %v9817
  %9819 = vmatmul.f32.gmra.mxu0 %v5084
  %v9820 = vpop.f32.mrf.mxu0
  %v9821 = vadd.f32 0.0, %v9820
  %9822 = vmatmul.f32.gmra.mxu0 %v5085
  %v9823 = vpop.f32.mrf.mxu0
  %v9824 = vadd.f32 0.0, %v9823
  %9825 = vmatmul.f32.gmra.mxu0 %v5086
  %v9826 = vpop.f32.mrf.mxu0
  %v9827 = vadd.f32 0.0, %v9826
  %9828 = vmatmul.f32.gmra.mxu0 %v5087
  %v9829 = vpop.f32.mrf.mxu0
  %v9830 = vadd.f32 0.0, %v9829
  %9831 = vmatmul.f32.gmra.mxu0 %v5088
  %v9832 = vpop.f32.mrf.mxu0
  %v9833 = vadd.f32 0.0, %v9832
  %9834 = vmatmul.f32.gmra.mxu0 %v5089
  %v9835 = vpop.f32.mrf.mxu0
  %v9836 = vadd.f32 0.0, %v9835
  %9837 = vmatmul.f32.gmra.mxu0 %v5090
  %v9838 = vpop.f32.mrf.mxu0
  %v9839 = vadd.f32 0.0, %v9838
  %9840 = vmatmul.f32.gmra.mxu0 %v5091
  %v9841 = vpop.f32.mrf.mxu0
  %v9842 = vadd.f32 0.0, %v9841
  %9843 = vdwg.mxu0
  %v9844 = vadd.f32 %v9554, %v9653
  %v9845 = vadd.f32 %v9555, %v9656
  %v9846 = vadd.f32 %v9556, %v9659
  %v9847 = vadd.f32 %v9557, %v9662
  %v9848 = vadd.f32 %v9558, %v9665
  %v9849 = vadd.f32 %v9559, %v9668
  %v9850 = vadd.f32 %v9560, %v9671
  %v9851 = vadd.f32 %v9561, %v9674
  %v9852 = vadd.f32 %v9562, %v9677
  %v9853 = vadd.f32 %v9563, %v9680
  %v9854 = vadd.f32 %v9564, %v9683
  %v9855 = vadd.f32 %v9565, %v9686
  %v9856 = vadd.f32 %v9566, %v9689
  %v9857 = vadd.f32 %v9567, %v9692
  %v9858 = vadd.f32 %v9568, %v9695
  %v9859 = vadd.f32 %v9569, %v9698
  %v9860 = vadd.f32 %v9570, %v9701
  %v9861 = vadd.f32 %v9571, %v9704
  %v9862 = vadd.f32 %v9572, %v9707
  %v9863 = vadd.f32 %v9573, %v9710
  %v9864 = vadd.f32 %v9574, %v9713
  %v9865 = vadd.f32 %v9575, %v9716
  %v9866 = vadd.f32 %v9576, %v9719
  %v9867 = vadd.f32 %v9577, %v9722
  %v9868 = vadd.f32 %v9578, %v9725
  %v9869 = vadd.f32 %v9579, %v9728
  %v9870 = vadd.f32 %v9580, %v9731
  %v9871 = vadd.f32 %v9581, %v9734
  %v9872 = vadd.f32 %v9582, %v9737
  %v9873 = vadd.f32 %v9583, %v9740
  %v9874 = vadd.f32 %v9584, %v9743
  %v9875 = vadd.f32 %v9585, %v9746
  %v9876 = vadd.f32 %v9586, %v9749
  %v9877 = vadd.f32 %v9587, %v9752
  %v9878 = vadd.f32 %v9588, %v9755
  %v9879 = vadd.f32 %v9589, %v9758
  %v9880 = vadd.f32 %v9590, %v9761
  %v9881 = vadd.f32 %v9591, %v9764
  %v9882 = vadd.f32 %v9592, %v9767
  %v9883 = vadd.f32 %v9593, %v9770
  %v9884 = vadd.f32 %v9594, %v9773
  %v9885 = vadd.f32 %v9595, %v9776
  %v9886 = vadd.f32 %v9596, %v9779
  %v9887 = vadd.f32 %v9597, %v9782
  %v9888 = vadd.f32 %v9598, %v9785
  %v9889 = vadd.f32 %v9599, %v9788
  %v9890 = vadd.f32 %v9600, %v9791
  %v9891 = vadd.f32 %v9601, %v9794
  %v9892 = vadd.f32 %v9602, %v9797
  %v9893 = vadd.f32 %v9603, %v9800
  %v9894 = vadd.f32 %v9604, %v9803
  %v9895 = vadd.f32 %v9605, %v9806
  %v9896 = vadd.f32 %v9606, %v9809
  %v9897 = vadd.f32 %v9607, %v9812
  %v9898 = vadd.f32 %v9608, %v9815
  %v9899 = vadd.f32 %v9609, %v9818
  %v9900 = vadd.f32 %v9610, %v9821
  %v9901 = vadd.f32 %v9611, %v9824
  %v9902 = vadd.f32 %v9612, %v9827
  %v9903 = vadd.f32 %v9613, %v9830
  %v9904 = vadd.f32 %v9614, %v9833
  %v9905 = vadd.f32 %v9615, %v9836
  %v9906 = vadd.f32 %v9616, %v9839
  %v9907 = vadd.f32 %v9617, %v9842
  %s9908 = scalar_lea.vmem %s4, 2176
  %v9909 = vld [vmem:[%s9908] sm:$0xff]
  %v9910 = vld [vmem:[%s9908 + $0x8] sm:$0xff]
  %v9911 = vld [vmem:[%s9908 + $0x10] sm:$0xff]
  %v9912 = vld [vmem:[%s9908 + $0x18] sm:$0xff]
  %v9913 = vld [vmem:[%s9908 + $0x20] sm:$0xff]
  %v9914 = vld [vmem:[%s9908 + $0x28] sm:$0xff]
  %v9915 = vld [vmem:[%s9908 + $0x30] sm:$0xff]
  %v9916 = vld [vmem:[%s9908 + $0x38] sm:$0xff]
  %v9917 = vld [vmem:[%s9908 + $0x40] sm:$0xff]
  %v9918 = vld [vmem:[%s9908 + $0x48] sm:$0xff]
  %v9919 = vld [vmem:[%s9908 + $0x50] sm:$0xff]
  %v9920 = vld [vmem:[%s9908 + $0x58] sm:$0xff]
  %v9921 = vld [vmem:[%s9908 + $0x60] sm:$0xff]
  %v9922 = vld [vmem:[%s9908 + $0x68] sm:$0xff]
  %v9923 = vld [vmem:[%s9908 + $0x70] sm:$0xff]
  %v9924 = vld [vmem:[%s9908 + $0x78] sm:$0xff]
  %9925 = vmatpush.msra.mxu0 %v9924
  %9926 = vmatpush.msra.mxu0 %v9923
  %9927 = vmatpush.msra.mxu0 %v9922
  %9928 = vmatpush.msra.mxu0 %v9921
  %9929 = vmatpush.msra.mxu0 %v9920
  %9930 = vmatpush.msra.mxu0 %v9919
  %9931 = vmatpush.msra.mxu0 %v9918
  %9932 = vmatpush.msra.mxu0 %v9917
  %9933 = vmatpush.msra.mxu0 %v9916
  %9934 = vmatpush.msra.mxu0 %v9915
  %9935 = vmatpush.msra.mxu0 %v9914
  %9936 = vmatpush.msra.mxu0 %v9913
  %9937 = vmatpush.msra.mxu0 %v9912
  %9938 = vmatpush.msra.mxu0 %v9911
  %9939 = vmatpush.msra.mxu0 %v9910
  %9940 = vmatpush.msra.mxu0 %v9909
  %9941 = vmatmul.f32.gmra.mxu0 %v5001
  %v9942 = vpop.f32.mrf.mxu0
  %v9943 = vadd.f32 0.0, %v9942
  %9944 = vmatmul.f32.gmra.mxu0 %v5002
  %v9945 = vpop.f32.mrf.mxu0
  %v9946 = vadd.f32 0.0, %v9945
  %9947 = vmatmul.f32.gmra.mxu0 %v5003
  %v9948 = vpop.f32.mrf.mxu0
  %v9949 = vadd.f32 0.0, %v9948
  %9950 = vmatmul.f32.gmra.mxu0 %v5004
  %v9951 = vpop.f32.mrf.mxu0
  %v9952 = vadd.f32 0.0, %v9951
  %9953 = vmatmul.f32.gmra.mxu0 %v5005
  %v9954 = vpop.f32.mrf.mxu0
  %v9955 = vadd.f32 0.0, %v9954
  %9956 = vmatmul.f32.gmra.mxu0 %v5006
  %v9957 = vpop.f32.mrf.mxu0
  %v9958 = vadd.f32 0.0, %v9957
  %9959 = vmatmul.f32.gmra.mxu0 %v5007
  %v9960 = vpop.f32.mrf.mxu0
  %v9961 = vadd.f32 0.0, %v9960
  %9962 = vmatmul.f32.gmra.mxu0 %v5008
  %v9963 = vpop.f32.mrf.mxu0
  %v9964 = vadd.f32 0.0, %v9963
  %9965 = vmatmul.f32.gmra.mxu0 %v5013
  %v9966 = vpop.f32.mrf.mxu0
  %v9967 = vadd.f32 0.0, %v9966
  %9968 = vmatmul.f32.gmra.mxu0 %v5014
  %v9969 = vpop.f32.mrf.mxu0
  %v9970 = vadd.f32 0.0, %v9969
  %9971 = vmatmul.f32.gmra.mxu0 %v5015
  %v9972 = vpop.f32.mrf.mxu0
  %v9973 = vadd.f32 0.0, %v9972
  %9974 = vmatmul.f32.gmra.mxu0 %v5016
  %v9975 = vpop.f32.mrf.mxu0
  %v9976 = vadd.f32 0.0, %v9975
  %9977 = vmatmul.f32.gmra.mxu0 %v5017
  %v9978 = vpop.f32.mrf.mxu0
  %v9979 = vadd.f32 0.0, %v9978
  %9980 = vmatmul.f32.gmra.mxu0 %v5018
  %v9981 = vpop.f32.mrf.mxu0
  %v9982 = vadd.f32 0.0, %v9981
  %9983 = vmatmul.f32.gmra.mxu0 %v5019
  %v9984 = vpop.f32.mrf.mxu0
  %v9985 = vadd.f32 0.0, %v9984
  %9986 = vmatmul.f32.gmra.mxu0 %v5020
  %v9987 = vpop.f32.mrf.mxu0
  %v9988 = vadd.f32 0.0, %v9987
  %9989 = vmatmul.f32.gmra.mxu0 %v5025
  %v9990 = vpop.f32.mrf.mxu0
  %v9991 = vadd.f32 0.0, %v9990
  %9992 = vmatmul.f32.gmra.mxu0 %v5026
  %v9993 = vpop.f32.mrf.mxu0
  %v9994 = vadd.f32 0.0, %v9993
  %9995 = vmatmul.f32.gmra.mxu0 %v5027
  %v9996 = vpop.f32.mrf.mxu0
  %v9997 = vadd.f32 0.0, %v9996
  %9998 = vmatmul.f32.gmra.mxu0 %v5028
  %v9999 = vpop.f32.mrf.mxu0
  %v10000 = vadd.f32 0.0, %v9999
  %10001 = vmatmul.f32.gmra.mxu0 %v5029
  %v10002 = vpop.f32.mrf.mxu0
  %v10003 = vadd.f32 0.0, %v10002
  %10004 = vmatmul.f32.gmra.mxu0 %v5030
  %v10005 = vpop.f32.mrf.mxu0
  %v10006 = vadd.f32 0.0, %v10005
  %10007 = vmatmul.f32.gmra.mxu0 %v5031
  %v10008 = vpop.f32.mrf.mxu0
  %v10009 = vadd.f32 0.0, %v10008
  %10010 = vmatmul.f32.gmra.mxu0 %v5032
  %v10011 = vpop.f32.mrf.mxu0
  %v10012 = vadd.f32 0.0, %v10011
  %10013 = vmatmul.f32.gmra.mxu0 %v5037
  %v10014 = vpop.f32.mrf.mxu0
  %v10015 = vadd.f32 0.0, %v10014
  %10016 = vmatmul.f32.gmra.mxu0 %v5038
  %v10017 = vpop.f32.mrf.mxu0
  %v10018 = vadd.f32 0.0, %v10017
  %10019 = vmatmul.f32.gmra.mxu0 %v5039
  %v10020 = vpop.f32.mrf.mxu0
  %v10021 = vadd.f32 0.0, %v10020
  %10022 = vmatmul.f32.gmra.mxu0 %v5040
  %v10023 = vpop.f32.mrf.mxu0
  %v10024 = vadd.f32 0.0, %v10023
  %10025 = vmatmul.f32.gmra.mxu0 %v5041
  %v10026 = vpop.f32.mrf.mxu0
  %v10027 = vadd.f32 0.0, %v10026
  %10028 = vmatmul.f32.gmra.mxu0 %v5042
  %v10029 = vpop.f32.mrf.mxu0
  %v10030 = vadd.f32 0.0, %v10029
  %10031 = vmatmul.f32.gmra.mxu0 %v5043
  %v10032 = vpop.f32.mrf.mxu0
  %v10033 = vadd.f32 0.0, %v10032
  %10034 = vmatmul.f32.gmra.mxu0 %v5044
  %v10035 = vpop.f32.mrf.mxu0
  %v10036 = vadd.f32 0.0, %v10035
  %10037 = vmatmul.f32.gmra.mxu0 %v5049
  %v10038 = vpop.f32.mrf.mxu0
  %v10039 = vadd.f32 0.0, %v10038
  %10040 = vmatmul.f32.gmra.mxu0 %v5050
  %v10041 = vpop.f32.mrf.mxu0
  %v10042 = vadd.f32 0.0, %v10041
  %10043 = vmatmul.f32.gmra.mxu0 %v5051
  %v10044 = vpop.f32.mrf.mxu0
  %v10045 = vadd.f32 0.0, %v10044
  %10046 = vmatmul.f32.gmra.mxu0 %v5052
  %v10047 = vpop.f32.mrf.mxu0
  %v10048 = vadd.f32 0.0, %v10047
  %10049 = vmatmul.f32.gmra.mxu0 %v5053
  %v10050 = vpop.f32.mrf.mxu0
  %v10051 = vadd.f32 0.0, %v10050
  %10052 = vmatmul.f32.gmra.mxu0 %v5054
  %v10053 = vpop.f32.mrf.mxu0
  %v10054 = vadd.f32 0.0, %v10053
  %10055 = vmatmul.f32.gmra.mxu0 %v5055
  %v10056 = vpop.f32.mrf.mxu0
  %v10057 = vadd.f32 0.0, %v10056
  %10058 = vmatmul.f32.gmra.mxu0 %v5056
  %v10059 = vpop.f32.mrf.mxu0
  %v10060 = vadd.f32 0.0, %v10059
  %10061 = vmatmul.f32.gmra.mxu0 %v5061
  %v10062 = vpop.f32.mrf.mxu0
  %v10063 = vadd.f32 0.0, %v10062
  %10064 = vmatmul.f32.gmra.mxu0 %v5062
  %v10065 = vpop.f32.mrf.mxu0
  %v10066 = vadd.f32 0.0, %v10065
  %10067 = vmatmul.f32.gmra.mxu0 %v5063
  %v10068 = vpop.f32.mrf.mxu0
  %v10069 = vadd.f32 0.0, %v10068
  %10070 = vmatmul.f32.gmra.mxu0 %v5064
  %v10071 = vpop.f32.mrf.mxu0
  %v10072 = vadd.f32 0.0, %v10071
  %10073 = vmatmul.f32.gmra.mxu0 %v5065
  %v10074 = vpop.f32.mrf.mxu0
  %v10075 = vadd.f32 0.0, %v10074
  %10076 = vmatmul.f32.gmra.mxu0 %v5066
  %v10077 = vpop.f32.mrf.mxu0
  %v10078 = vadd.f32 0.0, %v10077
  %10079 = vmatmul.f32.gmra.mxu0 %v5067
  %v10080 = vpop.f32.mrf.mxu0
  %v10081 = vadd.f32 0.0, %v10080
  %10082 = vmatmul.f32.gmra.mxu0 %v5068
  %v10083 = vpop.f32.mrf.mxu0
  %v10084 = vadd.f32 0.0, %v10083
  %10085 = vmatmul.f32.gmra.mxu0 %v5073
  %v10086 = vpop.f32.mrf.mxu0
  %v10087 = vadd.f32 0.0, %v10086
  %10088 = vmatmul.f32.gmra.mxu0 %v5074
  %v10089 = vpop.f32.mrf.mxu0
  %v10090 = vadd.f32 0.0, %v10089
  %10091 = vmatmul.f32.gmra.mxu0 %v5075
  %v10092 = vpop.f32.mrf.mxu0
  %v10093 = vadd.f32 0.0, %v10092
  %10094 = vmatmul.f32.gmra.mxu0 %v5076
  %v10095 = vpop.f32.mrf.mxu0
  %v10096 = vadd.f32 0.0, %v10095
  %10097 = vmatmul.f32.gmra.mxu0 %v5077
  %v10098 = vpop.f32.mrf.mxu0
  %v10099 = vadd.f32 0.0, %v10098
  %10100 = vmatmul.f32.gmra.mxu0 %v5078
  %v10101 = vpop.f32.mrf.mxu0
  %v10102 = vadd.f32 0.0, %v10101
  %10103 = vmatmul.f32.gmra.mxu0 %v5079
  %v10104 = vpop.f32.mrf.mxu0
  %v10105 = vadd.f32 0.0, %v10104
  %10106 = vmatmul.f32.gmra.mxu0 %v5080
  %v10107 = vpop.f32.mrf.mxu0
  %v10108 = vadd.f32 0.0, %v10107
  %10109 = vmatmul.f32.gmra.mxu0 %v5085
  %v10110 = vpop.f32.mrf.mxu0
  %v10111 = vadd.f32 0.0, %v10110
  %10112 = vmatmul.f32.gmra.mxu0 %v5086
  %v10113 = vpop.f32.mrf.mxu0
  %v10114 = vadd.f32 0.0, %v10113
  %10115 = vmatmul.f32.gmra.mxu0 %v5087
  %v10116 = vpop.f32.mrf.mxu0
  %v10117 = vadd.f32 0.0, %v10116
  %10118 = vmatmul.f32.gmra.mxu0 %v5088
  %v10119 = vpop.f32.mrf.mxu0
  %v10120 = vadd.f32 0.0, %v10119
  %10121 = vmatmul.f32.gmra.mxu0 %v5089
  %v10122 = vpop.f32.mrf.mxu0
  %v10123 = vadd.f32 0.0, %v10122
  %10124 = vmatmul.f32.gmra.mxu0 %v5090
  %v10125 = vpop.f32.mrf.mxu0
  %v10126 = vadd.f32 0.0, %v10125
  %10127 = vmatmul.f32.gmra.mxu0 %v5091
  %v10128 = vpop.f32.mrf.mxu0
  %v10129 = vadd.f32 0.0, %v10128
  %10130 = vmatmul.f32.gmra.mxu0 %v5092
  %v10131 = vpop.f32.mrf.mxu0
  %v10132 = vadd.f32 0.0, %v10131
  %10133 = vdwg.mxu0
  %v10134 = vadd.f32 %v9844, %v9943
  %v10135 = vadd.f32 %v9845, %v9946
  %v10136 = vadd.f32 %v9846, %v9949
  %v10137 = vadd.f32 %v9847, %v9952
  %v10138 = vadd.f32 %v9848, %v9955
  %v10139 = vadd.f32 %v9849, %v9958
  %v10140 = vadd.f32 %v9850, %v9961
  %v10141 = vadd.f32 %v9851, %v9964
  %v10142 = vadd.f32 %v9852, %v9967
  %v10143 = vadd.f32 %v9853, %v9970
  %v10144 = vadd.f32 %v9854, %v9973
  %v10145 = vadd.f32 %v9855, %v9976
  %v10146 = vadd.f32 %v9856, %v9979
  %v10147 = vadd.f32 %v9857, %v9982
  %v10148 = vadd.f32 %v9858, %v9985
  %v10149 = vadd.f32 %v9859, %v9988
  %v10150 = vadd.f32 %v9860, %v9991
  %v10151 = vadd.f32 %v9861, %v9994
  %v10152 = vadd.f32 %v9862, %v9997
  %v10153 = vadd.f32 %v9863, %v10000
  %v10154 = vadd.f32 %v9864, %v10003
  %v10155 = vadd.f32 %v9865, %v10006
  %v10156 = vadd.f32 %v9866, %v10009
  %v10157 = vadd.f32 %v9867, %v10012
  %v10158 = vadd.f32 %v9868, %v10015
  %v10159 = vadd.f32 %v9869, %v10018
  %v10160 = vadd.f32 %v9870, %v10021
  %v10161 = vadd.f32 %v9871, %v10024
  %v10162 = vadd.f32 %v9872, %v10027
  %v10163 = vadd.f32 %v9873, %v10030
  %v10164 = vadd.f32 %v9874, %v10033
  %v10165 = vadd.f32 %v9875, %v10036
  %v10166 = vadd.f32 %v9876, %v10039
  %v10167 = vadd.f32 %v9877, %v10042
  %v10168 = vadd.f32 %v9878, %v10045
  %v10169 = vadd.f32 %v9879, %v10048
  %v10170 = vadd.f32 %v9880, %v10051
  %v10171 = vadd.f32 %v9881, %v10054
  %v10172 = vadd.f32 %v9882, %v10057
  %v10173 = vadd.f32 %v9883, %v10060
  %v10174 = vadd.f32 %v9884, %v10063
  %v10175 = vadd.f32 %v9885, %v10066
  %v10176 = vadd.f32 %v9886, %v10069
  %v10177 = vadd.f32 %v9887, %v10072
  %v10178 = vadd.f32 %v9888, %v10075
  %v10179 = vadd.f32 %v9889, %v10078
  %v10180 = vadd.f32 %v9890, %v10081
  %v10181 = vadd.f32 %v9891, %v10084
  %v10182 = vadd.f32 %v9892, %v10087
  %v10183 = vadd.f32 %v9893, %v10090
  %v10184 = vadd.f32 %v9894, %v10093
  %v10185 = vadd.f32 %v9895, %v10096
  %v10186 = vadd.f32 %v9896, %v10099
  %v10187 = vadd.f32 %v9897, %v10102
  %v10188 = vadd.f32 %v9898, %v10105
  %v10189 = vadd.f32 %v9899, %v10108
  %v10190 = vadd.f32 %v9900, %v10111
  %v10191 = vadd.f32 %v9901, %v10114
  %v10192 = vadd.f32 %v9902, %v10117
  %v10193 = vadd.f32 %v9903, %v10120
  %v10194 = vadd.f32 %v9904, %v10123
  %v10195 = vadd.f32 %v9905, %v10126
  %v10196 = vadd.f32 %v9906, %v10129
  %v10197 = vadd.f32 %v9907, %v10132
  %s10198 = scalar_lea.vmem %s4, 2304
  %v10199 = vld [vmem:[%s10198] sm:$0xff]
  %v10200 = vld [vmem:[%s10198 + $0x8] sm:$0xff]
  %v10201 = vld [vmem:[%s10198 + $0x10] sm:$0xff]
  %v10202 = vld [vmem:[%s10198 + $0x18] sm:$0xff]
  %v10203 = vld [vmem:[%s10198 + $0x20] sm:$0xff]
  %v10204 = vld [vmem:[%s10198 + $0x28] sm:$0xff]
  %v10205 = vld [vmem:[%s10198 + $0x30] sm:$0xff]
  %v10206 = vld [vmem:[%s10198 + $0x38] sm:$0xff]
  %v10207 = vld [vmem:[%s10198 + $0x40] sm:$0xff]
  %v10208 = vld [vmem:[%s10198 + $0x48] sm:$0xff]
  %v10209 = vld [vmem:[%s10198 + $0x50] sm:$0xff]
  %v10210 = vld [vmem:[%s10198 + $0x58] sm:$0xff]
  %v10211 = vld [vmem:[%s10198 + $0x60] sm:$0xff]
  %v10212 = vld [vmem:[%s10198 + $0x68] sm:$0xff]
  %v10213 = vld [vmem:[%s10198 + $0x70] sm:$0xff]
  %v10214 = vld [vmem:[%s10198 + $0x78] sm:$0xff]
  %10215 = vmatpush.msra.mxu0 %v10214
  %10216 = vmatpush.msra.mxu0 %v10213
  %10217 = vmatpush.msra.mxu0 %v10212
  %10218 = vmatpush.msra.mxu0 %v10211
  %10219 = vmatpush.msra.mxu0 %v10210
  %10220 = vmatpush.msra.mxu0 %v10209
  %10221 = vmatpush.msra.mxu0 %v10208
  %10222 = vmatpush.msra.mxu0 %v10207
  %10223 = vmatpush.msra.mxu0 %v10206
  %10224 = vmatpush.msra.mxu0 %v10205
  %10225 = vmatpush.msra.mxu0 %v10204
  %10226 = vmatpush.msra.mxu0 %v10203
  %10227 = vmatpush.msra.mxu0 %v10202
  %10228 = vmatpush.msra.mxu0 %v10201
  %10229 = vmatpush.msra.mxu0 %v10200
  %10230 = vmatpush.msra.mxu0 %v10199
  %10231 = vmatmul.f32.gmra.mxu0 %v5002
  %v10232 = vpop.f32.mrf.mxu0
  %v10233 = vadd.f32 0.0, %v10232
  %10234 = vmatmul.f32.gmra.mxu0 %v5003
  %v10235 = vpop.f32.mrf.mxu0
  %v10236 = vadd.f32 0.0, %v10235
  %10237 = vmatmul.f32.gmra.mxu0 %v5004
  %v10238 = vpop.f32.mrf.mxu0
  %v10239 = vadd.f32 0.0, %v10238
  %10240 = vmatmul.f32.gmra.mxu0 %v5005
  %v10241 = vpop.f32.mrf.mxu0
  %v10242 = vadd.f32 0.0, %v10241
  %10243 = vmatmul.f32.gmra.mxu0 %v5006
  %v10244 = vpop.f32.mrf.mxu0
  %v10245 = vadd.f32 0.0, %v10244
  %10246 = vmatmul.f32.gmra.mxu0 %v5007
  %v10247 = vpop.f32.mrf.mxu0
  %v10248 = vadd.f32 0.0, %v10247
  %10249 = vmatmul.f32.gmra.mxu0 %v5008
  %v10250 = vpop.f32.mrf.mxu0
  %v10251 = vadd.f32 0.0, %v10250
  %10252 = vmatmul.f32.gmra.mxu0 %v5009
  %v10253 = vpop.f32.mrf.mxu0
  %v10254 = vadd.f32 0.0, %v10253
  %10255 = vmatmul.f32.gmra.mxu0 %v5014
  %v10256 = vpop.f32.mrf.mxu0
  %v10257 = vadd.f32 0.0, %v10256
  %10258 = vmatmul.f32.gmra.mxu0 %v5015
  %v10259 = vpop.f32.mrf.mxu0
  %v10260 = vadd.f32 0.0, %v10259
  %10261 = vmatmul.f32.gmra.mxu0 %v5016
  %v10262 = vpop.f32.mrf.mxu0
  %v10263 = vadd.f32 0.0, %v10262
  %10264 = vmatmul.f32.gmra.mxu0 %v5017
  %v10265 = vpop.f32.mrf.mxu0
  %v10266 = vadd.f32 0.0, %v10265
  %10267 = vmatmul.f32.gmra.mxu0 %v5018
  %v10268 = vpop.f32.mrf.mxu0
  %v10269 = vadd.f32 0.0, %v10268
  %10270 = vmatmul.f32.gmra.mxu0 %v5019
  %v10271 = vpop.f32.mrf.mxu0
  %v10272 = vadd.f32 0.0, %v10271
  %10273 = vmatmul.f32.gmra.mxu0 %v5020
  %v10274 = vpop.f32.mrf.mxu0
  %v10275 = vadd.f32 0.0, %v10274
  %10276 = vmatmul.f32.gmra.mxu0 %v5021
  %v10277 = vpop.f32.mrf.mxu0
  %v10278 = vadd.f32 0.0, %v10277
  %10279 = vmatmul.f32.gmra.mxu0 %v5026
  %v10280 = vpop.f32.mrf.mxu0
  %v10281 = vadd.f32 0.0, %v10280
  %10282 = vmatmul.f32.gmra.mxu0 %v5027
  %v10283 = vpop.f32.mrf.mxu0
  %v10284 = vadd.f32 0.0, %v10283
  %10285 = vmatmul.f32.gmra.mxu0 %v5028
  %v10286 = vpop.f32.mrf.mxu0
  %v10287 = vadd.f32 0.0, %v10286
  %10288 = vmatmul.f32.gmra.mxu0 %v5029
  %v10289 = vpop.f32.mrf.mxu0
  %v10290 = vadd.f32 0.0, %v10289
  %10291 = vmatmul.f32.gmra.mxu0 %v5030
  %v10292 = vpop.f32.mrf.mxu0
  %v10293 = vadd.f32 0.0, %v10292
  %10294 = vmatmul.f32.gmra.mxu0 %v5031
  %v10295 = vpop.f32.mrf.mxu0
  %v10296 = vadd.f32 0.0, %v10295
  %10297 = vmatmul.f32.gmra.mxu0 %v5032
  %v10298 = vpop.f32.mrf.mxu0
  %v10299 = vadd.f32 0.0, %v10298
  %10300 = vmatmul.f32.gmra.mxu0 %v5033
  %v10301 = vpop.f32.mrf.mxu0
  %v10302 = vadd.f32 0.0, %v10301
  %10303 = vmatmul.f32.gmra.mxu0 %v5038
  %v10304 = vpop.f32.mrf.mxu0
  %v10305 = vadd.f32 0.0, %v10304
  %10306 = vmatmul.f32.gmra.mxu0 %v5039
  %v10307 = vpop.f32.mrf.mxu0
  %v10308 = vadd.f32 0.0, %v10307
  %10309 = vmatmul.f32.gmra.mxu0 %v5040
  %v10310 = vpop.f32.mrf.mxu0
  %v10311 = vadd.f32 0.0, %v10310
  %10312 = vmatmul.f32.gmra.mxu0 %v5041
  %v10313 = vpop.f32.mrf.mxu0
  %v10314 = vadd.f32 0.0, %v10313
  %10315 = vmatmul.f32.gmra.mxu0 %v5042
  %v10316 = vpop.f32.mrf.mxu0
  %v10317 = vadd.f32 0.0, %v10316
  %10318 = vmatmul.f32.gmra.mxu0 %v5043
  %v10319 = vpop.f32.mrf.mxu0
  %v10320 = vadd.f32 0.0, %v10319
  %10321 = vmatmul.f32.gmra.mxu0 %v5044
  %v10322 = vpop.f32.mrf.mxu0
  %v10323 = vadd.f32 0.0, %v10322
  %10324 = vmatmul.f32.gmra.mxu0 %v5045
  %v10325 = vpop.f32.mrf.mxu0
  %v10326 = vadd.f32 0.0, %v10325
  %10327 = vmatmul.f32.gmra.mxu0 %v5050
  %v10328 = vpop.f32.mrf.mxu0
  %v10329 = vadd.f32 0.0, %v10328
  %10330 = vmatmul.f32.gmra.mxu0 %v5051
  %v10331 = vpop.f32.mrf.mxu0
  %v10332 = vadd.f32 0.0, %v10331
  %10333 = vmatmul.f32.gmra.mxu0 %v5052
  %v10334 = vpop.f32.mrf.mxu0
  %v10335 = vadd.f32 0.0, %v10334
  %10336 = vmatmul.f32.gmra.mxu0 %v5053
  %v10337 = vpop.f32.mrf.mxu0
  %v10338 = vadd.f32 0.0, %v10337
  %10339 = vmatmul.f32.gmra.mxu0 %v5054
  %v10340 = vpop.f32.mrf.mxu0
  %v10341 = vadd.f32 0.0, %v10340
  %10342 = vmatmul.f32.gmra.mxu0 %v5055
  %v10343 = vpop.f32.mrf.mxu0
  %v10344 = vadd.f32 0.0, %v10343
  %10345 = vmatmul.f32.gmra.mxu0 %v5056
  %v10346 = vpop.f32.mrf.mxu0
  %v10347 = vadd.f32 0.0, %v10346
  %10348 = vmatmul.f32.gmra.mxu0 %v5057
  %v10349 = vpop.f32.mrf.mxu0
  %v10350 = vadd.f32 0.0, %v10349
  %10351 = vmatmul.f32.gmra.mxu0 %v5062
  %v10352 = vpop.f32.mrf.mxu0
  %v10353 = vadd.f32 0.0, %v10352
  %10354 = vmatmul.f32.gmra.mxu0 %v5063
  %v10355 = vpop.f32.mrf.mxu0
  %v10356 = vadd.f32 0.0, %v10355
  %10357 = vmatmul.f32.gmra.mxu0 %v5064
  %v10358 = vpop.f32.mrf.mxu0
  %v10359 = vadd.f32 0.0, %v10358
  %10360 = vmatmul.f32.gmra.mxu0 %v5065
  %v10361 = vpop.f32.mrf.mxu0
  %v10362 = vadd.f32 0.0, %v10361
  %10363 = vmatmul.f32.gmra.mxu0 %v5066
  %v10364 = vpop.f32.mrf.mxu0
  %v10365 = vadd.f32 0.0, %v10364
  %10366 = vmatmul.f32.gmra.mxu0 %v5067
  %v10367 = vpop.f32.mrf.mxu0
  %v10368 = vadd.f32 0.0, %v10367
  %10369 = vmatmul.f32.gmra.mxu0 %v5068
  %v10370 = vpop.f32.mrf.mxu0
  %v10371 = vadd.f32 0.0, %v10370
  %10372 = vmatmul.f32.gmra.mxu0 %v5069
  %v10373 = vpop.f32.mrf.mxu0
  %v10374 = vadd.f32 0.0, %v10373
  %10375 = vmatmul.f32.gmra.mxu0 %v5074
  %v10376 = vpop.f32.mrf.mxu0
  %v10377 = vadd.f32 0.0, %v10376
  %10378 = vmatmul.f32.gmra.mxu0 %v5075
  %v10379 = vpop.f32.mrf.mxu0
  %v10380 = vadd.f32 0.0, %v10379
  %10381 = vmatmul.f32.gmra.mxu0 %v5076
  %v10382 = vpop.f32.mrf.mxu0
  %v10383 = vadd.f32 0.0, %v10382
  %10384 = vmatmul.f32.gmra.mxu0 %v5077
  %v10385 = vpop.f32.mrf.mxu0
  %v10386 = vadd.f32 0.0, %v10385
  %10387 = vmatmul.f32.gmra.mxu0 %v5078
  %v10388 = vpop.f32.mrf.mxu0
  %v10389 = vadd.f32 0.0, %v10388
  %10390 = vmatmul.f32.gmra.mxu0 %v5079
  %v10391 = vpop.f32.mrf.mxu0
  %v10392 = vadd.f32 0.0, %v10391
  %10393 = vmatmul.f32.gmra.mxu0 %v5080
  %v10394 = vpop.f32.mrf.mxu0
  %v10395 = vadd.f32 0.0, %v10394
  %10396 = vmatmul.f32.gmra.mxu0 %v5081
  %v10397 = vpop.f32.mrf.mxu0
  %v10398 = vadd.f32 0.0, %v10397
  %10399 = vmatmul.f32.gmra.mxu0 %v5086
  %v10400 = vpop.f32.mrf.mxu0
  %v10401 = vadd.f32 0.0, %v10400
  %10402 = vmatmul.f32.gmra.mxu0 %v5087
  %v10403 = vpop.f32.mrf.mxu0
  %v10404 = vadd.f32 0.0, %v10403
  %10405 = vmatmul.f32.gmra.mxu0 %v5088
  %v10406 = vpop.f32.mrf.mxu0
  %v10407 = vadd.f32 0.0, %v10406
  %10408 = vmatmul.f32.gmra.mxu0 %v5089
  %v10409 = vpop.f32.mrf.mxu0
  %v10410 = vadd.f32 0.0, %v10409
  %10411 = vmatmul.f32.gmra.mxu0 %v5090
  %v10412 = vpop.f32.mrf.mxu0
  %v10413 = vadd.f32 0.0, %v10412
  %10414 = vmatmul.f32.gmra.mxu0 %v5091
  %v10415 = vpop.f32.mrf.mxu0
  %v10416 = vadd.f32 0.0, %v10415
  %10417 = vmatmul.f32.gmra.mxu0 %v5092
  %v10418 = vpop.f32.mrf.mxu0
  %v10419 = vadd.f32 0.0, %v10418
  %10420 = vmatmul.f32.gmra.mxu0 %v5093
  %v10421 = vpop.f32.mrf.mxu0
  %v10422 = vadd.f32 0.0, %v10421
  %10423 = vdwg.mxu0
  %v10424 = vadd.f32 %v10134, %v10233
  %v10425 = vadd.f32 %v10135, %v10236
  %v10426 = vadd.f32 %v10136, %v10239
  %v10427 = vadd.f32 %v10137, %v10242
  %v10428 = vadd.f32 %v10138, %v10245
  %v10429 = vadd.f32 %v10139, %v10248
  %v10430 = vadd.f32 %v10140, %v10251
  %v10431 = vadd.f32 %v10141, %v10254
  %v10432 = vadd.f32 %v10142, %v10257
  %v10433 = vadd.f32 %v10143, %v10260
  %v10434 = vadd.f32 %v10144, %v10263
  %v10435 = vadd.f32 %v10145, %v10266
  %v10436 = vadd.f32 %v10146, %v10269
  %v10437 = vadd.f32 %v10147, %v10272
  %v10438 = vadd.f32 %v10148, %v10275
  %v10439 = vadd.f32 %v10149, %v10278
  %v10440 = vadd.f32 %v10150, %v10281
  %v10441 = vadd.f32 %v10151, %v10284
  %v10442 = vadd.f32 %v10152, %v10287
  %v10443 = vadd.f32 %v10153, %v10290
  %v10444 = vadd.f32 %v10154, %v10293
  %v10445 = vadd.f32 %v10155, %v10296
  %v10446 = vadd.f32 %v10156, %v10299
  %v10447 = vadd.f32 %v10157, %v10302
  %v10448 = vadd.f32 %v10158, %v10305
  %v10449 = vadd.f32 %v10159, %v10308
  %v10450 = vadd.f32 %v10160, %v10311
  %v10451 = vadd.f32 %v10161, %v10314
  %v10452 = vadd.f32 %v10162, %v10317
  %v10453 = vadd.f32 %v10163, %v10320
  %v10454 = vadd.f32 %v10164, %v10323
  %v10455 = vadd.f32 %v10165, %v10326
  %v10456 = vadd.f32 %v10166, %v10329
  %v10457 = vadd.f32 %v10167, %v10332
  %v10458 = vadd.f32 %v10168, %v10335
  %v10459 = vadd.f32 %v10169, %v10338
  %v10460 = vadd.f32 %v10170, %v10341
  %v10461 = vadd.f32 %v10171, %v10344
  %v10462 = vadd.f32 %v10172, %v10347
  %v10463 = vadd.f32 %v10173, %v10350
  %v10464 = vadd.f32 %v10174, %v10353
  %v10465 = vadd.f32 %v10175, %v10356
  %v10466 = vadd.f32 %v10176, %v10359
  %v10467 = vadd.f32 %v10177, %v10362
  %v10468 = vadd.f32 %v10178, %v10365
  %v10469 = vadd.f32 %v10179, %v10368
  %v10470 = vadd.f32 %v10180, %v10371
  %v10471 = vadd.f32 %v10181, %v10374
  %v10472 = vadd.f32 %v10182, %v10377
  %v10473 = vadd.f32 %v10183, %v10380
  %v10474 = vadd.f32 %v10184, %v10383
  %v10475 = vadd.f32 %v10185, %v10386
  %v10476 = vadd.f32 %v10186, %v10389
  %v10477 = vadd.f32 %v10187, %v10392
  %v10478 = vadd.f32 %v10188, %v10395
  %v10479 = vadd.f32 %v10189, %v10398
  %v10480 = vadd.f32 %v10190, %v10401
  %v10481 = vadd.f32 %v10191, %v10404
  %v10482 = vadd.f32 %v10192, %v10407
  %v10483 = vadd.f32 %v10193, %v10410
  %v10484 = vadd.f32 %v10194, %v10413
  %v10485 = vadd.f32 %v10195, %v10416
  %v10486 = vadd.f32 %v10196, %v10419
  %v10487 = vadd.f32 %v10197, %v10422
  %s10488 = scalar_lea.vmem %s4, 2432
  %v10489 = vld [vmem:[%s10488] sm:$0xff]
  %v10490 = vld [vmem:[%s10488 + $0x8] sm:$0xff]
  %v10491 = vld [vmem:[%s10488 + $0x10] sm:$0xff]
  %v10492 = vld [vmem:[%s10488 + $0x18] sm:$0xff]
  %v10493 = vld [vmem:[%s10488 + $0x20] sm:$0xff]
  %v10494 = vld [vmem:[%s10488 + $0x28] sm:$0xff]
  %v10495 = vld [vmem:[%s10488 + $0x30] sm:$0xff]
  %v10496 = vld [vmem:[%s10488 + $0x38] sm:$0xff]
  %v10497 = vld [vmem:[%s10488 + $0x40] sm:$0xff]
  %v10498 = vld [vmem:[%s10488 + $0x48] sm:$0xff]
  %v10499 = vld [vmem:[%s10488 + $0x50] sm:$0xff]
  %v10500 = vld [vmem:[%s10488 + $0x58] sm:$0xff]
  %v10501 = vld [vmem:[%s10488 + $0x60] sm:$0xff]
  %v10502 = vld [vmem:[%s10488 + $0x68] sm:$0xff]
  %v10503 = vld [vmem:[%s10488 + $0x70] sm:$0xff]
  %v10504 = vld [vmem:[%s10488 + $0x78] sm:$0xff]
  %10505 = vmatpush.msra.mxu0 %v10504
  %10506 = vmatpush.msra.mxu0 %v10503
  %10507 = vmatpush.msra.mxu0 %v10502
  %10508 = vmatpush.msra.mxu0 %v10501
  %10509 = vmatpush.msra.mxu0 %v10500
  %10510 = vmatpush.msra.mxu0 %v10499
  %10511 = vmatpush.msra.mxu0 %v10498
  %10512 = vmatpush.msra.mxu0 %v10497
  %10513 = vmatpush.msra.mxu0 %v10496
  %10514 = vmatpush.msra.mxu0 %v10495
  %10515 = vmatpush.msra.mxu0 %v10494
  %10516 = vmatpush.msra.mxu0 %v10493
  %10517 = vmatpush.msra.mxu0 %v10492
  %10518 = vmatpush.msra.mxu0 %v10491
  %10519 = vmatpush.msra.mxu0 %v10490
  %10520 = vmatpush.msra.mxu0 %v10489
  %10521 = vmatmul.f32.gmra.mxu0 %v5003
  %v10522 = vpop.f32.mrf.mxu0
  %v10523 = vadd.f32 0.0, %v10522
  %10524 = vmatmul.f32.gmra.mxu0 %v5004
  %v10525 = vpop.f32.mrf.mxu0
  %v10526 = vadd.f32 0.0, %v10525
  %10527 = vmatmul.f32.gmra.mxu0 %v5005
  %v10528 = vpop.f32.mrf.mxu0
  %v10529 = vadd.f32 0.0, %v10528
  %10530 = vmatmul.f32.gmra.mxu0 %v5006
  %v10531 = vpop.f32.mrf.mxu0
  %v10532 = vadd.f32 0.0, %v10531
  %10533 = vmatmul.f32.gmra.mxu0 %v5007
  %v10534 = vpop.f32.mrf.mxu0
  %v10535 = vadd.f32 0.0, %v10534
  %10536 = vmatmul.f32.gmra.mxu0 %v5008
  %v10537 = vpop.f32.mrf.mxu0
  %v10538 = vadd.f32 0.0, %v10537
  %10539 = vmatmul.f32.gmra.mxu0 %v5009
  %v10540 = vpop.f32.mrf.mxu0
  %v10541 = vadd.f32 0.0, %v10540
  %10542 = vmatmul.f32.gmra.mxu0 %v5010
  %v10543 = vpop.f32.mrf.mxu0
  %v10544 = vadd.f32 0.0, %v10543
  %10545 = vmatmul.f32.gmra.mxu0 %v5015
  %v10546 = vpop.f32.mrf.mxu0
  %v10547 = vadd.f32 0.0, %v10546
  %10548 = vmatmul.f32.gmra.mxu0 %v5016
  %v10549 = vpop.f32.mrf.mxu0
  %v10550 = vadd.f32 0.0, %v10549
  %10551 = vmatmul.f32.gmra.mxu0 %v5017
  %v10552 = vpop.f32.mrf.mxu0
  %v10553 = vadd.f32 0.0, %v10552
  %10554 = vmatmul.f32.gmra.mxu0 %v5018
  %v10555 = vpop.f32.mrf.mxu0
  %v10556 = vadd.f32 0.0, %v10555
  %10557 = vmatmul.f32.gmra.mxu0 %v5019
  %v10558 = vpop.f32.mrf.mxu0
  %v10559 = vadd.f32 0.0, %v10558
  %10560 = vmatmul.f32.gmra.mxu0 %v5020
  %v10561 = vpop.f32.mrf.mxu0
  %v10562 = vadd.f32 0.0, %v10561
  %10563 = vmatmul.f32.gmra.mxu0 %v5021
  %v10564 = vpop.f32.mrf.mxu0
  %v10565 = vadd.f32 0.0, %v10564
  %10566 = vmatmul.f32.gmra.mxu0 %v5022
  %v10567 = vpop.f32.mrf.mxu0
  %v10568 = vadd.f32 0.0, %v10567
  %10569 = vmatmul.f32.gmra.mxu0 %v5027
  %v10570 = vpop.f32.mrf.mxu0
  %v10571 = vadd.f32 0.0, %v10570
  %10572 = vmatmul.f32.gmra.mxu0 %v5028
  %v10573 = vpop.f32.mrf.mxu0
  %v10574 = vadd.f32 0.0, %v10573
  %10575 = vmatmul.f32.gmra.mxu0 %v5029
  %v10576 = vpop.f32.mrf.mxu0
  %v10577 = vadd.f32 0.0, %v10576
  %10578 = vmatmul.f32.gmra.mxu0 %v5030
  %v10579 = vpop.f32.mrf.mxu0
  %v10580 = vadd.f32 0.0, %v10579
  %10581 = vmatmul.f32.gmra.mxu0 %v5031
  %v10582 = vpop.f32.mrf.mxu0
  %v10583 = vadd.f32 0.0, %v10582
  %10584 = vmatmul.f32.gmra.mxu0 %v5032
  %v10585 = vpop.f32.mrf.mxu0
  %v10586 = vadd.f32 0.0, %v10585
  %10587 = vmatmul.f32.gmra.mxu0 %v5033
  %v10588 = vpop.f32.mrf.mxu0
  %v10589 = vadd.f32 0.0, %v10588
  %10590 = vmatmul.f32.gmra.mxu0 %v5034
  %v10591 = vpop.f32.mrf.mxu0
  %v10592 = vadd.f32 0.0, %v10591
  %10593 = vmatmul.f32.gmra.mxu0 %v5039
  %v10594 = vpop.f32.mrf.mxu0
  %v10595 = vadd.f32 0.0, %v10594
  %10596 = vmatmul.f32.gmra.mxu0 %v5040
  %v10597 = vpop.f32.mrf.mxu0
  %v10598 = vadd.f32 0.0, %v10597
  %10599 = vmatmul.f32.gmra.mxu0 %v5041
  %v10600 = vpop.f32.mrf.mxu0
  %v10601 = vadd.f32 0.0, %v10600
  %10602 = vmatmul.f32.gmra.mxu0 %v5042
  %v10603 = vpop.f32.mrf.mxu0
  %v10604 = vadd.f32 0.0, %v10603
  %10605 = vmatmul.f32.gmra.mxu0 %v5043
  %v10606 = vpop.f32.mrf.mxu0
  %v10607 = vadd.f32 0.0, %v10606
  %10608 = vmatmul.f32.gmra.mxu0 %v5044
  %v10609 = vpop.f32.mrf.mxu0
  %v10610 = vadd.f32 0.0, %v10609
  %10611 = vmatmul.f32.gmra.mxu0 %v5045
  %v10612 = vpop.f32.mrf.mxu0
  %v10613 = vadd.f32 0.0, %v10612
  %10614 = vmatmul.f32.gmra.mxu0 %v5046
  %v10615 = vpop.f32.mrf.mxu0
  %v10616 = vadd.f32 0.0, %v10615
  %10617 = vmatmul.f32.gmra.mxu0 %v5051
  %v10618 = vpop.f32.mrf.mxu0
  %v10619 = vadd.f32 0.0, %v10618
  %10620 = vmatmul.f32.gmra.mxu0 %v5052
  %v10621 = vpop.f32.mrf.mxu0
  %v10622 = vadd.f32 0.0, %v10621
  %10623 = vmatmul.f32.gmra.mxu0 %v5053
  %v10624 = vpop.f32.mrf.mxu0
  %v10625 = vadd.f32 0.0, %v10624
  %10626 = vmatmul.f32.gmra.mxu0 %v5054
  %v10627 = vpop.f32.mrf.mxu0
  %v10628 = vadd.f32 0.0, %v10627
  %10629 = vmatmul.f32.gmra.mxu0 %v5055
  %v10630 = vpop.f32.mrf.mxu0
  %v10631 = vadd.f32 0.0, %v10630
  %10632 = vmatmul.f32.gmra.mxu0 %v5056
  %v10633 = vpop.f32.mrf.mxu0
  %v10634 = vadd.f32 0.0, %v10633
  %10635 = vmatmul.f32.gmra.mxu0 %v5057
  %v10636 = vpop.f32.mrf.mxu0
  %v10637 = vadd.f32 0.0, %v10636
  %10638 = vmatmul.f32.gmra.mxu0 %v5058
  %v10639 = vpop.f32.mrf.mxu0
  %v10640 = vadd.f32 0.0, %v10639
  %10641 = vmatmul.f32.gmra.mxu0 %v5063
  %v10642 = vpop.f32.mrf.mxu0
  %v10643 = vadd.f32 0.0, %v10642
  %10644 = vmatmul.f32.gmra.mxu0 %v5064
  %v10645 = vpop.f32.mrf.mxu0
  %v10646 = vadd.f32 0.0, %v10645
  %10647 = vmatmul.f32.gmra.mxu0 %v5065
  %v10648 = vpop.f32.mrf.mxu0
  %v10649 = vadd.f32 0.0, %v10648
  %10650 = vmatmul.f32.gmra.mxu0 %v5066
  %v10651 = vpop.f32.mrf.mxu0
  %v10652 = vadd.f32 0.0, %v10651
  %10653 = vmatmul.f32.gmra.mxu0 %v5067
  %v10654 = vpop.f32.mrf.mxu0
  %v10655 = vadd.f32 0.0, %v10654
  %10656 = vmatmul.f32.gmra.mxu0 %v5068
  %v10657 = vpop.f32.mrf.mxu0
  %v10658 = vadd.f32 0.0, %v10657
  %10659 = vmatmul.f32.gmra.mxu0 %v5069
  %v10660 = vpop.f32.mrf.mxu0
  %v10661 = vadd.f32 0.0, %v10660
  %10662 = vmatmul.f32.gmra.mxu0 %v5070
  %v10663 = vpop.f32.mrf.mxu0
  %v10664 = vadd.f32 0.0, %v10663
  %10665 = vmatmul.f32.gmra.mxu0 %v5075
  %v10666 = vpop.f32.mrf.mxu0
  %v10667 = vadd.f32 0.0, %v10666
  %10668 = vmatmul.f32.gmra.mxu0 %v5076
  %v10669 = vpop.f32.mrf.mxu0
  %v10670 = vadd.f32 0.0, %v10669
  %10671 = vmatmul.f32.gmra.mxu0 %v5077
  %v10672 = vpop.f32.mrf.mxu0
  %v10673 = vadd.f32 0.0, %v10672
  %10674 = vmatmul.f32.gmra.mxu0 %v5078
  %v10675 = vpop.f32.mrf.mxu0
  %v10676 = vadd.f32 0.0, %v10675
  %10677 = vmatmul.f32.gmra.mxu0 %v5079
  %v10678 = vpop.f32.mrf.mxu0
  %v10679 = vadd.f32 0.0, %v10678
  %10680 = vmatmul.f32.gmra.mxu0 %v5080
  %v10681 = vpop.f32.mrf.mxu0
  %v10682 = vadd.f32 0.0, %v10681
  %10683 = vmatmul.f32.gmra.mxu0 %v5081
  %v10684 = vpop.f32.mrf.mxu0
  %v10685 = vadd.f32 0.0, %v10684
  %10686 = vmatmul.f32.gmra.mxu0 %v5082
  %v10687 = vpop.f32.mrf.mxu0
  %v10688 = vadd.f32 0.0, %v10687
  %10689 = vmatmul.f32.gmra.mxu0 %v5087
  %v10690 = vpop.f32.mrf.mxu0
  %v10691 = vadd.f32 0.0, %v10690
  %10692 = vmatmul.f32.gmra.mxu0 %v5088
  %v10693 = vpop.f32.mrf.mxu0
  %v10694 = vadd.f32 0.0, %v10693
  %10695 = vmatmul.f32.gmra.mxu0 %v5089
  %v10696 = vpop.f32.mrf.mxu0
  %v10697 = vadd.f32 0.0, %v10696
  %10698 = vmatmul.f32.gmra.mxu0 %v5090
  %v10699 = vpop.f32.mrf.mxu0
  %v10700 = vadd.f32 0.0, %v10699
  %10701 = vmatmul.f32.gmra.mxu0 %v5091
  %v10702 = vpop.f32.mrf.mxu0
  %v10703 = vadd.f32 0.0, %v10702
  %10704 = vmatmul.f32.gmra.mxu0 %v5092
  %v10705 = vpop.f32.mrf.mxu0
  %v10706 = vadd.f32 0.0, %v10705
  %10707 = vmatmul.f32.gmra.mxu0 %v5093
  %v10708 = vpop.f32.mrf.mxu0
  %v10709 = vadd.f32 0.0, %v10708
  %10710 = vmatmul.f32.gmra.mxu0 %v5094
  %v10711 = vpop.f32.mrf.mxu0
  %v10712 = vadd.f32 0.0, %v10711
  %10713 = vdwg.mxu0
  %v10714 = vadd.f32 %v10424, %v10523
  %v10715 = vadd.f32 %v10425, %v10526
  %v10716 = vadd.f32 %v10426, %v10529
  %v10717 = vadd.f32 %v10427, %v10532
  %v10718 = vadd.f32 %v10428, %v10535
  %v10719 = vadd.f32 %v10429, %v10538
  %v10720 = vadd.f32 %v10430, %v10541
  %v10721 = vadd.f32 %v10431, %v10544
  %v10722 = vadd.f32 %v10432, %v10547
  %v10723 = vadd.f32 %v10433, %v10550
  %v10724 = vadd.f32 %v10434, %v10553
  %v10725 = vadd.f32 %v10435, %v10556
  %v10726 = vadd.f32 %v10436, %v10559
  %v10727 = vadd.f32 %v10437, %v10562
  %v10728 = vadd.f32 %v10438, %v10565
  %v10729 = vadd.f32 %v10439, %v10568
  %v10730 = vadd.f32 %v10440, %v10571
  %v10731 = vadd.f32 %v10441, %v10574
  %v10732 = vadd.f32 %v10442, %v10577
  %v10733 = vadd.f32 %v10443, %v10580
  %v10734 = vadd.f32 %v10444, %v10583
  %v10735 = vadd.f32 %v10445, %v10586
  %v10736 = vadd.f32 %v10446, %v10589
  %v10737 = vadd.f32 %v10447, %v10592
  %v10738 = vadd.f32 %v10448, %v10595
  %v10739 = vadd.f32 %v10449, %v10598
  %v10740 = vadd.f32 %v10450, %v10601
  %v10741 = vadd.f32 %v10451, %v10604
  %v10742 = vadd.f32 %v10452, %v10607
  %v10743 = vadd.f32 %v10453, %v10610
  %v10744 = vadd.f32 %v10454, %v10613
  %v10745 = vadd.f32 %v10455, %v10616
  %v10746 = vadd.f32 %v10456, %v10619
  %v10747 = vadd.f32 %v10457, %v10622
  %v10748 = vadd.f32 %v10458, %v10625
  %v10749 = vadd.f32 %v10459, %v10628
  %v10750 = vadd.f32 %v10460, %v10631
  %v10751 = vadd.f32 %v10461, %v10634
  %v10752 = vadd.f32 %v10462, %v10637
  %v10753 = vadd.f32 %v10463, %v10640
  %v10754 = vadd.f32 %v10464, %v10643
  %v10755 = vadd.f32 %v10465, %v10646
  %v10756 = vadd.f32 %v10466, %v10649
  %v10757 = vadd.f32 %v10467, %v10652
  %v10758 = vadd.f32 %v10468, %v10655
  %v10759 = vadd.f32 %v10469, %v10658
  %v10760 = vadd.f32 %v10470, %v10661
  %v10761 = vadd.f32 %v10471, %v10664
  %v10762 = vadd.f32 %v10472, %v10667
  %v10763 = vadd.f32 %v10473, %v10670
  %v10764 = vadd.f32 %v10474, %v10673
  %v10765 = vadd.f32 %v10475, %v10676
  %v10766 = vadd.f32 %v10476, %v10679
  %v10767 = vadd.f32 %v10477, %v10682
  %v10768 = vadd.f32 %v10478, %v10685
  %v10769 = vadd.f32 %v10479, %v10688
  %v10770 = vadd.f32 %v10480, %v10691
  %v10771 = vadd.f32 %v10481, %v10694
  %v10772 = vadd.f32 %v10482, %v10697
  %v10773 = vadd.f32 %v10483, %v10700
  %v10774 = vadd.f32 %v10484, %v10703
  %v10775 = vadd.f32 %v10485, %v10706
  %v10776 = vadd.f32 %v10486, %v10709
  %v10777 = vadd.f32 %v10487, %v10712
  %s10778 = scalar_lea.vmem %s4, 2560
  %v10779 = vld [vmem:[%s10778] sm:$0xff]
  %v10780 = vld [vmem:[%s10778 + $0x8] sm:$0xff]
  %v10781 = vld [vmem:[%s10778 + $0x10] sm:$0xff]
  %v10782 = vld [vmem:[%s10778 + $0x18] sm:$0xff]
  %v10783 = vld [vmem:[%s10778 + $0x20] sm:$0xff]
  %v10784 = vld [vmem:[%s10778 + $0x28] sm:$0xff]
  %v10785 = vld [vmem:[%s10778 + $0x30] sm:$0xff]
  %v10786 = vld [vmem:[%s10778 + $0x38] sm:$0xff]
  %v10787 = vld [vmem:[%s10778 + $0x40] sm:$0xff]
  %v10788 = vld [vmem:[%s10778 + $0x48] sm:$0xff]
  %v10789 = vld [vmem:[%s10778 + $0x50] sm:$0xff]
  %v10790 = vld [vmem:[%s10778 + $0x58] sm:$0xff]
  %v10791 = vld [vmem:[%s10778 + $0x60] sm:$0xff]
  %v10792 = vld [vmem:[%s10778 + $0x68] sm:$0xff]
  %v10793 = vld [vmem:[%s10778 + $0x70] sm:$0xff]
  %v10794 = vld [vmem:[%s10778 + $0x78] sm:$0xff]
  %10795 = vmatpush.msra.mxu0 %v10794
  %10796 = vmatpush.msra.mxu0 %v10793
  %10797 = vmatpush.msra.mxu0 %v10792
  %10798 = vmatpush.msra.mxu0 %v10791
  %10799 = vmatpush.msra.mxu0 %v10790
  %10800 = vmatpush.msra.mxu0 %v10789
  %10801 = vmatpush.msra.mxu0 %v10788
  %10802 = vmatpush.msra.mxu0 %v10787
  %10803 = vmatpush.msra.mxu0 %v10786
  %10804 = vmatpush.msra.mxu0 %v10785
  %10805 = vmatpush.msra.mxu0 %v10784
  %10806 = vmatpush.msra.mxu0 %v10783
  %10807 = vmatpush.msra.mxu0 %v10782
  %10808 = vmatpush.msra.mxu0 %v10781
  %10809 = vmatpush.msra.mxu0 %v10780
  %10810 = vmatpush.msra.mxu0 %v10779
  %10811 = vmatmul.f32.gmra.mxu0 %v5011
  %v10812 = vpop.f32.mrf.mxu0
  %v10813 = vadd.f32 0.0, %v10812
  %10814 = vmatmul.f32.gmra.mxu0 %v5012
  %v10815 = vpop.f32.mrf.mxu0
  %v10816 = vadd.f32 0.0, %v10815
  %10817 = vmatmul.f32.gmra.mxu0 %v5013
  %v10818 = vpop.f32.mrf.mxu0
  %v10819 = vadd.f32 0.0, %v10818
  %10820 = vmatmul.f32.gmra.mxu0 %v5014
  %v10821 = vpop.f32.mrf.mxu0
  %v10822 = vadd.f32 0.0, %v10821
  %10823 = vmatmul.f32.gmra.mxu0 %v5015
  %v10824 = vpop.f32.mrf.mxu0
  %v10825 = vadd.f32 0.0, %v10824
  %10826 = vmatmul.f32.gmra.mxu0 %v5016
  %v10827 = vpop.f32.mrf.mxu0
  %v10828 = vadd.f32 0.0, %v10827
  %10829 = vmatmul.f32.gmra.mxu0 %v5017
  %v10830 = vpop.f32.mrf.mxu0
  %v10831 = vadd.f32 0.0, %v10830
  %10832 = vmatmul.f32.gmra.mxu0 %v5018
  %v10833 = vpop.f32.mrf.mxu0
  %v10834 = vadd.f32 0.0, %v10833
  %10835 = vmatmul.f32.gmra.mxu0 %v5023
  %v10836 = vpop.f32.mrf.mxu0
  %v10837 = vadd.f32 0.0, %v10836
  %10838 = vmatmul.f32.gmra.mxu0 %v5024
  %v10839 = vpop.f32.mrf.mxu0
  %v10840 = vadd.f32 0.0, %v10839
  %10841 = vmatmul.f32.gmra.mxu0 %v5025
  %v10842 = vpop.f32.mrf.mxu0
  %v10843 = vadd.f32 0.0, %v10842
  %10844 = vmatmul.f32.gmra.mxu0 %v5026
  %v10845 = vpop.f32.mrf.mxu0
  %v10846 = vadd.f32 0.0, %v10845
  %10847 = vmatmul.f32.gmra.mxu0 %v5027
  %v10848 = vpop.f32.mrf.mxu0
  %v10849 = vadd.f32 0.0, %v10848
  %10850 = vmatmul.f32.gmra.mxu0 %v5028
  %v10851 = vpop.f32.mrf.mxu0
  %v10852 = vadd.f32 0.0, %v10851
  %10853 = vmatmul.f32.gmra.mxu0 %v5029
  %v10854 = vpop.f32.mrf.mxu0
  %v10855 = vadd.f32 0.0, %v10854
  %10856 = vmatmul.f32.gmra.mxu0 %v5030
  %v10857 = vpop.f32.mrf.mxu0
  %v10858 = vadd.f32 0.0, %v10857
  %10859 = vmatmul.f32.gmra.mxu0 %v5035
  %v10860 = vpop.f32.mrf.mxu0
  %v10861 = vadd.f32 0.0, %v10860
  %10862 = vmatmul.f32.gmra.mxu0 %v5036
  %v10863 = vpop.f32.mrf.mxu0
  %v10864 = vadd.f32 0.0, %v10863
  %10865 = vmatmul.f32.gmra.mxu0 %v5037
  %v10866 = vpop.f32.mrf.mxu0
  %v10867 = vadd.f32 0.0, %v10866
  %10868 = vmatmul.f32.gmra.mxu0 %v5038
  %v10869 = vpop.f32.mrf.mxu0
  %v10870 = vadd.f32 0.0, %v10869
  %10871 = vmatmul.f32.gmra.mxu0 %v5039
  %v10872 = vpop.f32.mrf.mxu0
  %v10873 = vadd.f32 0.0, %v10872
  %10874 = vmatmul.f32.gmra.mxu0 %v5040
  %v10875 = vpop.f32.mrf.mxu0
  %v10876 = vadd.f32 0.0, %v10875
  %10877 = vmatmul.f32.gmra.mxu0 %v5041
  %v10878 = vpop.f32.mrf.mxu0
  %v10879 = vadd.f32 0.0, %v10878
  %10880 = vmatmul.f32.gmra.mxu0 %v5042
  %v10881 = vpop.f32.mrf.mxu0
  %v10882 = vadd.f32 0.0, %v10881
  %10883 = vmatmul.f32.gmra.mxu0 %v5047
  %v10884 = vpop.f32.mrf.mxu0
  %v10885 = vadd.f32 0.0, %v10884
  %10886 = vmatmul.f32.gmra.mxu0 %v5048
  %v10887 = vpop.f32.mrf.mxu0
  %v10888 = vadd.f32 0.0, %v10887
  %10889 = vmatmul.f32.gmra.mxu0 %v5049
  %v10890 = vpop.f32.mrf.mxu0
  %v10891 = vadd.f32 0.0, %v10890
  %10892 = vmatmul.f32.gmra.mxu0 %v5050
  %v10893 = vpop.f32.mrf.mxu0
  %v10894 = vadd.f32 0.0, %v10893
  %10895 = vmatmul.f32.gmra.mxu0 %v5051
  %v10896 = vpop.f32.mrf.mxu0
  %v10897 = vadd.f32 0.0, %v10896
  %10898 = vmatmul.f32.gmra.mxu0 %v5052
  %v10899 = vpop.f32.mrf.mxu0
  %v10900 = vadd.f32 0.0, %v10899
  %10901 = vmatmul.f32.gmra.mxu0 %v5053
  %v10902 = vpop.f32.mrf.mxu0
  %v10903 = vadd.f32 0.0, %v10902
  %10904 = vmatmul.f32.gmra.mxu0 %v5054
  %v10905 = vpop.f32.mrf.mxu0
  %v10906 = vadd.f32 0.0, %v10905
  %10907 = vmatmul.f32.gmra.mxu0 %v5059
  %v10908 = vpop.f32.mrf.mxu0
  %v10909 = vadd.f32 0.0, %v10908
  %10910 = vmatmul.f32.gmra.mxu0 %v5060
  %v10911 = vpop.f32.mrf.mxu0
  %v10912 = vadd.f32 0.0, %v10911
  %10913 = vmatmul.f32.gmra.mxu0 %v5061
  %v10914 = vpop.f32.mrf.mxu0
  %v10915 = vadd.f32 0.0, %v10914
  %10916 = vmatmul.f32.gmra.mxu0 %v5062
  %v10917 = vpop.f32.mrf.mxu0
  %v10918 = vadd.f32 0.0, %v10917
  %10919 = vmatmul.f32.gmra.mxu0 %v5063
  %v10920 = vpop.f32.mrf.mxu0
  %v10921 = vadd.f32 0.0, %v10920
  %10922 = vmatmul.f32.gmra.mxu0 %v5064
  %v10923 = vpop.f32.mrf.mxu0
  %v10924 = vadd.f32 0.0, %v10923
  %10925 = vmatmul.f32.gmra.mxu0 %v5065
  %v10926 = vpop.f32.mrf.mxu0
  %v10927 = vadd.f32 0.0, %v10926
  %10928 = vmatmul.f32.gmra.mxu0 %v5066
  %v10929 = vpop.f32.mrf.mxu0
  %v10930 = vadd.f32 0.0, %v10929
  %10931 = vmatmul.f32.gmra.mxu0 %v5071
  %v10932 = vpop.f32.mrf.mxu0
  %v10933 = vadd.f32 0.0, %v10932
  %10934 = vmatmul.f32.gmra.mxu0 %v5072
  %v10935 = vpop.f32.mrf.mxu0
  %v10936 = vadd.f32 0.0, %v10935
  %10937 = vmatmul.f32.gmra.mxu0 %v5073
  %v10938 = vpop.f32.mrf.mxu0
  %v10939 = vadd.f32 0.0, %v10938
  %10940 = vmatmul.f32.gmra.mxu0 %v5074
  %v10941 = vpop.f32.mrf.mxu0
  %v10942 = vadd.f32 0.0, %v10941
  %10943 = vmatmul.f32.gmra.mxu0 %v5075
  %v10944 = vpop.f32.mrf.mxu0
  %v10945 = vadd.f32 0.0, %v10944
  %10946 = vmatmul.f32.gmra.mxu0 %v5076
  %v10947 = vpop.f32.mrf.mxu0
  %v10948 = vadd.f32 0.0, %v10947
  %10949 = vmatmul.f32.gmra.mxu0 %v5077
  %v10950 = vpop.f32.mrf.mxu0
  %v10951 = vadd.f32 0.0, %v10950
  %10952 = vmatmul.f32.gmra.mxu0 %v5078
  %v10953 = vpop.f32.mrf.mxu0
  %v10954 = vadd.f32 0.0, %v10953
  %10955 = vmatmul.f32.gmra.mxu0 %v5083
  %v10956 = vpop.f32.mrf.mxu0
  %v10957 = vadd.f32 0.0, %v10956
  %10958 = vmatmul.f32.gmra.mxu0 %v5084
  %v10959 = vpop.f32.mrf.mxu0
  %v10960 = vadd.f32 0.0, %v10959
  %10961 = vmatmul.f32.gmra.mxu0 %v5085
  %v10962 = vpop.f32.mrf.mxu0
  %v10963 = vadd.f32 0.0, %v10962
  %10964 = vmatmul.f32.gmra.mxu0 %v5086
  %v10965 = vpop.f32.mrf.mxu0
  %v10966 = vadd.f32 0.0, %v10965
  %10967 = vmatmul.f32.gmra.mxu0 %v5087
  %v10968 = vpop.f32.mrf.mxu0
  %v10969 = vadd.f32 0.0, %v10968
  %10970 = vmatmul.f32.gmra.mxu0 %v5088
  %v10971 = vpop.f32.mrf.mxu0
  %v10972 = vadd.f32 0.0, %v10971
  %10973 = vmatmul.f32.gmra.mxu0 %v5089
  %v10974 = vpop.f32.mrf.mxu0
  %v10975 = vadd.f32 0.0, %v10974
  %10976 = vmatmul.f32.gmra.mxu0 %v5090
  %v10977 = vpop.f32.mrf.mxu0
  %v10978 = vadd.f32 0.0, %v10977
  %10979 = vmatmul.f32.gmra.mxu0 %v5095
  %v10980 = vpop.f32.mrf.mxu0
  %v10981 = vadd.f32 0.0, %v10980
  %10982 = vmatmul.f32.gmra.mxu0 %v5096
  %v10983 = vpop.f32.mrf.mxu0
  %v10984 = vadd.f32 0.0, %v10983
  %10985 = vmatmul.f32.gmra.mxu0 %v5097
  %v10986 = vpop.f32.mrf.mxu0
  %v10987 = vadd.f32 0.0, %v10986
  %10988 = vmatmul.f32.gmra.mxu0 %v5098
  %v10989 = vpop.f32.mrf.mxu0
  %v10990 = vadd.f32 0.0, %v10989
  %10991 = vmatmul.f32.gmra.mxu0 %v5099
  %v10992 = vpop.f32.mrf.mxu0
  %v10993 = vadd.f32 0.0, %v10992
  %10994 = vmatmul.f32.gmra.mxu0 %v5100
  %v10995 = vpop.f32.mrf.mxu0
  %v10996 = vadd.f32 0.0, %v10995
  %10997 = vmatmul.f32.gmra.mxu0 %v5101
  %v10998 = vpop.f32.mrf.mxu0
  %v10999 = vadd.f32 0.0, %v10998
  %11000 = vmatmul.f32.gmra.mxu0 %v5102
  %v11001 = vpop.f32.mrf.mxu0
  %v11002 = vadd.f32 0.0, %v11001
  %11003 = vdwg.mxu0
  %v11004 = vadd.f32 %v10714, %v10813
  %v11005 = vadd.f32 %v10715, %v10816
  %v11006 = vadd.f32 %v10716, %v10819
  %v11007 = vadd.f32 %v10717, %v10822
  %v11008 = vadd.f32 %v10718, %v10825
  %v11009 = vadd.f32 %v10719, %v10828
  %v11010 = vadd.f32 %v10720, %v10831
  %v11011 = vadd.f32 %v10721, %v10834
  %v11012 = vadd.f32 %v10722, %v10837
  %v11013 = vadd.f32 %v10723, %v10840
  %v11014 = vadd.f32 %v10724, %v10843
  %v11015 = vadd.f32 %v10725, %v10846
  %v11016 = vadd.f32 %v10726, %v10849
  %v11017 = vadd.f32 %v10727, %v10852
  %v11018 = vadd.f32 %v10728, %v10855
  %v11019 = vadd.f32 %v10729, %v10858
  %v11020 = vadd.f32 %v10730, %v10861
  %v11021 = vadd.f32 %v10731, %v10864
  %v11022 = vadd.f32 %v10732, %v10867
  %v11023 = vadd.f32 %v10733, %v10870
  %v11024 = vadd.f32 %v10734, %v10873
  %v11025 = vadd.f32 %v10735, %v10876
  %v11026 = vadd.f32 %v10736, %v10879
  %v11027 = vadd.f32 %v10737, %v10882
  %v11028 = vadd.f32 %v10738, %v10885
  %v11029 = vadd.f32 %v10739, %v10888
  %v11030 = vadd.f32 %v10740, %v10891
  %v11031 = vadd.f32 %v10741, %v10894
  %v11032 = vadd.f32 %v10742, %v10897
  %v11033 = vadd.f32 %v10743, %v10900
  %v11034 = vadd.f32 %v10744, %v10903
  %v11035 = vadd.f32 %v10745, %v10906
  %v11036 = vadd.f32 %v10746, %v10909
  %v11037 = vadd.f32 %v10747, %v10912
  %v11038 = vadd.f32 %v10748, %v10915
  %v11039 = vadd.f32 %v10749, %v10918
  %v11040 = vadd.f32 %v10750, %v10921
  %v11041 = vadd.f32 %v10751, %v10924
  %v11042 = vadd.f32 %v10752, %v10927
  %v11043 = vadd.f32 %v10753, %v10930
  %v11044 = vadd.f32 %v10754, %v10933
  %v11045 = vadd.f32 %v10755, %v10936
  %v11046 = vadd.f32 %v10756, %v10939
  %v11047 = vadd.f32 %v10757, %v10942
  %v11048 = vadd.f32 %v10758, %v10945
  %v11049 = vadd.f32 %v10759, %v10948
  %v11050 = vadd.f32 %v10760, %v10951
  %v11051 = vadd.f32 %v10761, %v10954
  %v11052 = vadd.f32 %v10762, %v10957
  %v11053 = vadd.f32 %v10763, %v10960
  %v11054 = vadd.f32 %v10764, %v10963
  %v11055 = vadd.f32 %v10765, %v10966
  %v11056 = vadd.f32 %v10766, %v10969
  %v11057 = vadd.f32 %v10767, %v10972
  %v11058 = vadd.f32 %v10768, %v10975
  %v11059 = vadd.f32 %v10769, %v10978
  %v11060 = vadd.f32 %v10770, %v10981
  %v11061 = vadd.f32 %v10771, %v10984
  %v11062 = vadd.f32 %v10772, %v10987
  %v11063 = vadd.f32 %v10773, %v10990
  %v11064 = vadd.f32 %v10774, %v10993
  %v11065 = vadd.f32 %v10775, %v10996
  %v11066 = vadd.f32 %v10776, %v10999
  %v11067 = vadd.f32 %v10777, %v11002
  %s11068 = scalar_lea.vmem %s4, 2688
  %v11069 = vld [vmem:[%s11068] sm:$0xff]
  %v11070 = vld [vmem:[%s11068 + $0x8] sm:$0xff]
  %v11071 = vld [vmem:[%s11068 + $0x10] sm:$0xff]
  %v11072 = vld [vmem:[%s11068 + $0x18] sm:$0xff]
  %v11073 = vld [vmem:[%s11068 + $0x20] sm:$0xff]
  %v11074 = vld [vmem:[%s11068 + $0x28] sm:$0xff]
  %v11075 = vld [vmem:[%s11068 + $0x30] sm:$0xff]
  %v11076 = vld [vmem:[%s11068 + $0x38] sm:$0xff]
  %v11077 = vld [vmem:[%s11068 + $0x40] sm:$0xff]
  %v11078 = vld [vmem:[%s11068 + $0x48] sm:$0xff]
  %v11079 = vld [vmem:[%s11068 + $0x50] sm:$0xff]
  %v11080 = vld [vmem:[%s11068 + $0x58] sm:$0xff]
  %v11081 = vld [vmem:[%s11068 + $0x60] sm:$0xff]
  %v11082 = vld [vmem:[%s11068 + $0x68] sm:$0xff]
  %v11083 = vld [vmem:[%s11068 + $0x70] sm:$0xff]
  %v11084 = vld [vmem:[%s11068 + $0x78] sm:$0xff]
  %11085 = vmatpush.msra.mxu0 %v11084
  %11086 = vmatpush.msra.mxu0 %v11083
  %11087 = vmatpush.msra.mxu0 %v11082
  %11088 = vmatpush.msra.mxu0 %v11081
  %11089 = vmatpush.msra.mxu0 %v11080
  %11090 = vmatpush.msra.mxu0 %v11079
  %11091 = vmatpush.msra.mxu0 %v11078
  %11092 = vmatpush.msra.mxu0 %v11077
  %11093 = vmatpush.msra.mxu0 %v11076
  %11094 = vmatpush.msra.mxu0 %v11075
  %11095 = vmatpush.msra.mxu0 %v11074
  %11096 = vmatpush.msra.mxu0 %v11073
  %11097 = vmatpush.msra.mxu0 %v11072
  %11098 = vmatpush.msra.mxu0 %v11071
  %11099 = vmatpush.msra.mxu0 %v11070
  %11100 = vmatpush.msra.mxu0 %v11069
  %11101 = vmatmul.f32.gmra.mxu0 %v5012
  %v11102 = vpop.f32.mrf.mxu0
  %v11103 = vadd.f32 0.0, %v11102
  %11104 = vmatmul.f32.gmra.mxu0 %v5013
  %v11105 = vpop.f32.mrf.mxu0
  %v11106 = vadd.f32 0.0, %v11105
  %11107 = vmatmul.f32.gmra.mxu0 %v5014
  %v11108 = vpop.f32.mrf.mxu0
  %v11109 = vadd.f32 0.0, %v11108
  %11110 = vmatmul.f32.gmra.mxu0 %v5015
  %v11111 = vpop.f32.mrf.mxu0
  %v11112 = vadd.f32 0.0, %v11111
  %11113 = vmatmul.f32.gmra.mxu0 %v5016
  %v11114 = vpop.f32.mrf.mxu0
  %v11115 = vadd.f32 0.0, %v11114
  %11116 = vmatmul.f32.gmra.mxu0 %v5017
  %v11117 = vpop.f32.mrf.mxu0
  %v11118 = vadd.f32 0.0, %v11117
  %11119 = vmatmul.f32.gmra.mxu0 %v5018
  %v11120 = vpop.f32.mrf.mxu0
  %v11121 = vadd.f32 0.0, %v11120
  %11122 = vmatmul.f32.gmra.mxu0 %v5019
  %v11123 = vpop.f32.mrf.mxu0
  %v11124 = vadd.f32 0.0, %v11123
  %11125 = vmatmul.f32.gmra.mxu0 %v5024
  %v11126 = vpop.f32.mrf.mxu0
  %v11127 = vadd.f32 0.0, %v11126
  %11128 = vmatmul.f32.gmra.mxu0 %v5025
  %v11129 = vpop.f32.mrf.mxu0
  %v11130 = vadd.f32 0.0, %v11129
  %11131 = vmatmul.f32.gmra.mxu0 %v5026
  %v11132 = vpop.f32.mrf.mxu0
  %v11133 = vadd.f32 0.0, %v11132
  %11134 = vmatmul.f32.gmra.mxu0 %v5027
  %v11135 = vpop.f32.mrf.mxu0
  %v11136 = vadd.f32 0.0, %v11135
  %11137 = vmatmul.f32.gmra.mxu0 %v5028
  %v11138 = vpop.f32.mrf.mxu0
  %v11139 = vadd.f32 0.0, %v11138
  %11140 = vmatmul.f32.gmra.mxu0 %v5029
  %v11141 = vpop.f32.mrf.mxu0
  %v11142 = vadd.f32 0.0, %v11141
  %11143 = vmatmul.f32.gmra.mxu0 %v5030
  %v11144 = vpop.f32.mrf.mxu0
  %v11145 = vadd.f32 0.0, %v11144
  %11146 = vmatmul.f32.gmra.mxu0 %v5031
  %v11147 = vpop.f32.mrf.mxu0
  %v11148 = vadd.f32 0.0, %v11147
  %11149 = vmatmul.f32.gmra.mxu0 %v5036
  %v11150 = vpop.f32.mrf.mxu0
  %v11151 = vadd.f32 0.0, %v11150
  %11152 = vmatmul.f32.gmra.mxu0 %v5037
  %v11153 = vpop.f32.mrf.mxu0
  %v11154 = vadd.f32 0.0, %v11153
  %11155 = vmatmul.f32.gmra.mxu0 %v5038
  %v11156 = vpop.f32.mrf.mxu0
  %v11157 = vadd.f32 0.0, %v11156
  %11158 = vmatmul.f32.gmra.mxu0 %v5039
  %v11159 = vpop.f32.mrf.mxu0
  %v11160 = vadd.f32 0.0, %v11159
  %11161 = vmatmul.f32.gmra.mxu0 %v5040
  %v11162 = vpop.f32.mrf.mxu0
  %v11163 = vadd.f32 0.0, %v11162
  %11164 = vmatmul.f32.gmra.mxu0 %v5041
  %v11165 = vpop.f32.mrf.mxu0
  %v11166 = vadd.f32 0.0, %v11165
  %11167 = vmatmul.f32.gmra.mxu0 %v5042
  %v11168 = vpop.f32.mrf.mxu0
  %v11169 = vadd.f32 0.0, %v11168
  %11170 = vmatmul.f32.gmra.mxu0 %v5043
  %v11171 = vpop.f32.mrf.mxu0
  %v11172 = vadd.f32 0.0, %v11171
  %11173 = vmatmul.f32.gmra.mxu0 %v5048
  %v11174 = vpop.f32.mrf.mxu0
  %v11175 = vadd.f32 0.0, %v11174
  %11176 = vmatmul.f32.gmra.mxu0 %v5049
  %v11177 = vpop.f32.mrf.mxu0
  %v11178 = vadd.f32 0.0, %v11177
  %11179 = vmatmul.f32.gmra.mxu0 %v5050
  %v11180 = vpop.f32.mrf.mxu0
  %v11181 = vadd.f32 0.0, %v11180
  %11182 = vmatmul.f32.gmra.mxu0 %v5051
  %v11183 = vpop.f32.mrf.mxu0
  %v11184 = vadd.f32 0.0, %v11183
  %11185 = vmatmul.f32.gmra.mxu0 %v5052
  %v11186 = vpop.f32.mrf.mxu0
  %v11187 = vadd.f32 0.0, %v11186
  %11188 = vmatmul.f32.gmra.mxu0 %v5053
  %v11189 = vpop.f32.mrf.mxu0
  %v11190 = vadd.f32 0.0, %v11189
  %11191 = vmatmul.f32.gmra.mxu0 %v5054
  %v11192 = vpop.f32.mrf.mxu0
  %v11193 = vadd.f32 0.0, %v11192
  %11194 = vmatmul.f32.gmra.mxu0 %v5055
  %v11195 = vpop.f32.mrf.mxu0
  %v11196 = vadd.f32 0.0, %v11195
  %11197 = vmatmul.f32.gmra.mxu0 %v5060
  %v11198 = vpop.f32.mrf.mxu0
  %v11199 = vadd.f32 0.0, %v11198
  %11200 = vmatmul.f32.gmra.mxu0 %v5061
  %v11201 = vpop.f32.mrf.mxu0
  %v11202 = vadd.f32 0.0, %v11201
  %11203 = vmatmul.f32.gmra.mxu0 %v5062
  %v11204 = vpop.f32.mrf.mxu0
  %v11205 = vadd.f32 0.0, %v11204
  %11206 = vmatmul.f32.gmra.mxu0 %v5063
  %v11207 = vpop.f32.mrf.mxu0
  %v11208 = vadd.f32 0.0, %v11207
  %11209 = vmatmul.f32.gmra.mxu0 %v5064
  %v11210 = vpop.f32.mrf.mxu0
  %v11211 = vadd.f32 0.0, %v11210
  %11212 = vmatmul.f32.gmra.mxu0 %v5065
  %v11213 = vpop.f32.mrf.mxu0
  %v11214 = vadd.f32 0.0, %v11213
  %11215 = vmatmul.f32.gmra.mxu0 %v5066
  %v11216 = vpop.f32.mrf.mxu0
  %v11217 = vadd.f32 0.0, %v11216
  %11218 = vmatmul.f32.gmra.mxu0 %v5067
  %v11219 = vpop.f32.mrf.mxu0
  %v11220 = vadd.f32 0.0, %v11219
  %11221 = vmatmul.f32.gmra.mxu0 %v5072
  %v11222 = vpop.f32.mrf.mxu0
  %v11223 = vadd.f32 0.0, %v11222
  %11224 = vmatmul.f32.gmra.mxu0 %v5073
  %v11225 = vpop.f32.mrf.mxu0
  %v11226 = vadd.f32 0.0, %v11225
  %11227 = vmatmul.f32.gmra.mxu0 %v5074
  %v11228 = vpop.f32.mrf.mxu0
  %v11229 = vadd.f32 0.0, %v11228
  %11230 = vmatmul.f32.gmra.mxu0 %v5075
  %v11231 = vpop.f32.mrf.mxu0
  %v11232 = vadd.f32 0.0, %v11231
  %11233 = vmatmul.f32.gmra.mxu0 %v5076
  %v11234 = vpop.f32.mrf.mxu0
  %v11235 = vadd.f32 0.0, %v11234
  %11236 = vmatmul.f32.gmra.mxu0 %v5077
  %v11237 = vpop.f32.mrf.mxu0
  %v11238 = vadd.f32 0.0, %v11237
  %11239 = vmatmul.f32.gmra.mxu0 %v5078
  %v11240 = vpop.f32.mrf.mxu0
  %v11241 = vadd.f32 0.0, %v11240
  %11242 = vmatmul.f32.gmra.mxu0 %v5079
  %v11243 = vpop.f32.mrf.mxu0
  %v11244 = vadd.f32 0.0, %v11243
  %11245 = vmatmul.f32.gmra.mxu0 %v5084
  %v11246 = vpop.f32.mrf.mxu0
  %v11247 = vadd.f32 0.0, %v11246
  %11248 = vmatmul.f32.gmra.mxu0 %v5085
  %v11249 = vpop.f32.mrf.mxu0
  %v11250 = vadd.f32 0.0, %v11249
  %11251 = vmatmul.f32.gmra.mxu0 %v5086
  %v11252 = vpop.f32.mrf.mxu0
  %v11253 = vadd.f32 0.0, %v11252
  %11254 = vmatmul.f32.gmra.mxu0 %v5087
  %v11255 = vpop.f32.mrf.mxu0
  %v11256 = vadd.f32 0.0, %v11255
  %11257 = vmatmul.f32.gmra.mxu0 %v5088
  %v11258 = vpop.f32.mrf.mxu0
  %v11259 = vadd.f32 0.0, %v11258
  %11260 = vmatmul.f32.gmra.mxu0 %v5089
  %v11261 = vpop.f32.mrf.mxu0
  %v11262 = vadd.f32 0.0, %v11261
  %11263 = vmatmul.f32.gmra.mxu0 %v5090
  %v11264 = vpop.f32.mrf.mxu0
  %v11265 = vadd.f32 0.0, %v11264
  %11266 = vmatmul.f32.gmra.mxu0 %v5091
  %v11267 = vpop.f32.mrf.mxu0
  %v11268 = vadd.f32 0.0, %v11267
  %11269 = vmatmul.f32.gmra.mxu0 %v5096
  %v11270 = vpop.f32.mrf.mxu0
  %v11271 = vadd.f32 0.0, %v11270
  %11272 = vmatmul.f32.gmra.mxu0 %v5097
  %v11273 = vpop.f32.mrf.mxu0
  %v11274 = vadd.f32 0.0, %v11273
  %11275 = vmatmul.f32.gmra.mxu0 %v5098
  %v11276 = vpop.f32.mrf.mxu0
  %v11277 = vadd.f32 0.0, %v11276
  %11278 = vmatmul.f32.gmra.mxu0 %v5099
  %v11279 = vpop.f32.mrf.mxu0
  %v11280 = vadd.f32 0.0, %v11279
  %11281 = vmatmul.f32.gmra.mxu0 %v5100
  %v11282 = vpop.f32.mrf.mxu0
  %v11283 = vadd.f32 0.0, %v11282
  %11284 = vmatmul.f32.gmra.mxu0 %v5101
  %v11285 = vpop.f32.mrf.mxu0
  %v11286 = vadd.f32 0.0, %v11285
  %11287 = vmatmul.f32.gmra.mxu0 %v5102
  %v11288 = vpop.f32.mrf.mxu0
  %v11289 = vadd.f32 0.0, %v11288
  %11290 = vmatmul.f32.gmra.mxu0 %v5103
  %v11291 = vpop.f32.mrf.mxu0
  %v11292 = vadd.f32 0.0, %v11291
  %11293 = vdwg.mxu0
  %v11294 = vadd.f32 %v11004, %v11103
  %v11295 = vadd.f32 %v11005, %v11106
  %v11296 = vadd.f32 %v11006, %v11109
  %v11297 = vadd.f32 %v11007, %v11112
  %v11298 = vadd.f32 %v11008, %v11115
  %v11299 = vadd.f32 %v11009, %v11118
  %v11300 = vadd.f32 %v11010, %v11121
  %v11301 = vadd.f32 %v11011, %v11124
  %v11302 = vadd.f32 %v11012, %v11127
  %v11303 = vadd.f32 %v11013, %v11130
  %v11304 = vadd.f32 %v11014, %v11133
  %v11305 = vadd.f32 %v11015, %v11136
  %v11306 = vadd.f32 %v11016, %v11139
  %v11307 = vadd.f32 %v11017, %v11142
  %v11308 = vadd.f32 %v11018, %v11145
  %v11309 = vadd.f32 %v11019, %v11148
  %v11310 = vadd.f32 %v11020, %v11151
  %v11311 = vadd.f32 %v11021, %v11154
  %v11312 = vadd.f32 %v11022, %v11157
  %v11313 = vadd.f32 %v11023, %v11160
  %v11314 = vadd.f32 %v11024, %v11163
  %v11315 = vadd.f32 %v11025, %v11166
  %v11316 = vadd.f32 %v11026, %v11169
  %v11317 = vadd.f32 %v11027, %v11172
  %v11318 = vadd.f32 %v11028, %v11175
  %v11319 = vadd.f32 %v11029, %v11178
  %v11320 = vadd.f32 %v11030, %v11181
  %v11321 = vadd.f32 %v11031, %v11184
  %v11322 = vadd.f32 %v11032, %v11187
  %v11323 = vadd.f32 %v11033, %v11190
  %v11324 = vadd.f32 %v11034, %v11193
  %v11325 = vadd.f32 %v11035, %v11196
  %v11326 = vadd.f32 %v11036, %v11199
  %v11327 = vadd.f32 %v11037, %v11202
  %v11328 = vadd.f32 %v11038, %v11205
  %v11329 = vadd.f32 %v11039, %v11208
  %v11330 = vadd.f32 %v11040, %v11211
  %v11331 = vadd.f32 %v11041, %v11214
  %v11332 = vadd.f32 %v11042, %v11217
  %v11333 = vadd.f32 %v11043, %v11220
  %v11334 = vadd.f32 %v11044, %v11223
  %v11335 = vadd.f32 %v11045, %v11226
  %v11336 = vadd.f32 %v11046, %v11229
  %v11337 = vadd.f32 %v11047, %v11232
  %v11338 = vadd.f32 %v11048, %v11235
  %v11339 = vadd.f32 %v11049, %v11238
  %v11340 = vadd.f32 %v11050, %v11241
  %v11341 = vadd.f32 %v11051, %v11244
  %v11342 = vadd.f32 %v11052, %v11247
  %v11343 = vadd.f32 %v11053, %v11250
  %v11344 = vadd.f32 %v11054, %v11253
  %v11345 = vadd.f32 %v11055, %v11256
  %v11346 = vadd.f32 %v11056, %v11259
  %v11347 = vadd.f32 %v11057, %v11262
  %v11348 = vadd.f32 %v11058, %v11265
  %v11349 = vadd.f32 %v11059, %v11268
  %v11350 = vadd.f32 %v11060, %v11271
  %v11351 = vadd.f32 %v11061, %v11274
  %v11352 = vadd.f32 %v11062, %v11277
  %v11353 = vadd.f32 %v11063, %v11280
  %v11354 = vadd.f32 %v11064, %v11283
  %v11355 = vadd.f32 %v11065, %v11286
  %v11356 = vadd.f32 %v11066, %v11289
  %v11357 = vadd.f32 %v11067, %v11292
  %s11358 = scalar_lea.vmem %s4, 2816
  %v11359 = vld [vmem:[%s11358] sm:$0xff]
  %v11360 = vld [vmem:[%s11358 + $0x8] sm:$0xff]
  %v11361 = vld [vmem:[%s11358 + $0x10] sm:$0xff]
  %v11362 = vld [vmem:[%s11358 + $0x18] sm:$0xff]
  %v11363 = vld [vmem:[%s11358 + $0x20] sm:$0xff]
  %v11364 = vld [vmem:[%s11358 + $0x28] sm:$0xff]
  %v11365 = vld [vmem:[%s11358 + $0x30] sm:$0xff]
  %v11366 = vld [vmem:[%s11358 + $0x38] sm:$0xff]
  %v11367 = vld [vmem:[%s11358 + $0x40] sm:$0xff]
  %v11368 = vld [vmem:[%s11358 + $0x48] sm:$0xff]
  %v11369 = vld [vmem:[%s11358 + $0x50] sm:$0xff]
  %v11370 = vld [vmem:[%s11358 + $0x58] sm:$0xff]
  %v11371 = vld [vmem:[%s11358 + $0x60] sm:$0xff]
  %v11372 = vld [vmem:[%s11358 + $0x68] sm:$0xff]
  %v11373 = vld [vmem:[%s11358 + $0x70] sm:$0xff]
  %v11374 = vld [vmem:[%s11358 + $0x78] sm:$0xff]
  %11375 = vmatpush.msra.mxu0 %v11374
  %11376 = vmatpush.msra.mxu0 %v11373
  %11377 = vmatpush.msra.mxu0 %v11372
  %11378 = vmatpush.msra.mxu0 %v11371
  %11379 = vmatpush.msra.mxu0 %v11370
  %11380 = vmatpush.msra.mxu0 %v11369
  %11381 = vmatpush.msra.mxu0 %v11368
  %11382 = vmatpush.msra.mxu0 %v11367
  %11383 = vmatpush.msra.mxu0 %v11366
  %11384 = vmatpush.msra.mxu0 %v11365
  %11385 = vmatpush.msra.mxu0 %v11364
  %11386 = vmatpush.msra.mxu0 %v11363
  %11387 = vmatpush.msra.mxu0 %v11362
  %11388 = vmatpush.msra.mxu0 %v11361
  %11389 = vmatpush.msra.mxu0 %v11360
  %11390 = vmatpush.msra.mxu0 %v11359
  %11391 = vmatmul.f32.gmra.mxu0 %v5013
  %v11392 = vpop.f32.mrf.mxu0
  %v11393 = vadd.f32 0.0, %v11392
  %11394 = vmatmul.f32.gmra.mxu0 %v5014
  %v11395 = vpop.f32.mrf.mxu0
  %v11396 = vadd.f32 0.0, %v11395
  %11397 = vmatmul.f32.gmra.mxu0 %v5015
  %v11398 = vpop.f32.mrf.mxu0
  %v11399 = vadd.f32 0.0, %v11398
  %11400 = vmatmul.f32.gmra.mxu0 %v5016
  %v11401 = vpop.f32.mrf.mxu0
  %v11402 = vadd.f32 0.0, %v11401
  %11403 = vmatmul.f32.gmra.mxu0 %v5017
  %v11404 = vpop.f32.mrf.mxu0
  %v11405 = vadd.f32 0.0, %v11404
  %11406 = vmatmul.f32.gmra.mxu0 %v5018
  %v11407 = vpop.f32.mrf.mxu0
  %v11408 = vadd.f32 0.0, %v11407
  %11409 = vmatmul.f32.gmra.mxu0 %v5019
  %v11410 = vpop.f32.mrf.mxu0
  %v11411 = vadd.f32 0.0, %v11410
  %11412 = vmatmul.f32.gmra.mxu0 %v5020
  %v11413 = vpop.f32.mrf.mxu0
  %v11414 = vadd.f32 0.0, %v11413
  %11415 = vmatmul.f32.gmra.mxu0 %v5025
  %v11416 = vpop.f32.mrf.mxu0
  %v11417 = vadd.f32 0.0, %v11416
  %11418 = vmatmul.f32.gmra.mxu0 %v5026
  %v11419 = vpop.f32.mrf.mxu0
  %v11420 = vadd.f32 0.0, %v11419
  %11421 = vmatmul.f32.gmra.mxu0 %v5027
  %v11422 = vpop.f32.mrf.mxu0
  %v11423 = vadd.f32 0.0, %v11422
  %11424 = vmatmul.f32.gmra.mxu0 %v5028
  %v11425 = vpop.f32.mrf.mxu0
  %v11426 = vadd.f32 0.0, %v11425
  %11427 = vmatmul.f32.gmra.mxu0 %v5029
  %v11428 = vpop.f32.mrf.mxu0
  %v11429 = vadd.f32 0.0, %v11428
  %11430 = vmatmul.f32.gmra.mxu0 %v5030
  %v11431 = vpop.f32.mrf.mxu0
  %v11432 = vadd.f32 0.0, %v11431
  %11433 = vmatmul.f32.gmra.mxu0 %v5031
  %v11434 = vpop.f32.mrf.mxu0
  %v11435 = vadd.f32 0.0, %v11434
  %11436 = vmatmul.f32.gmra.mxu0 %v5032
  %v11437 = vpop.f32.mrf.mxu0
  %v11438 = vadd.f32 0.0, %v11437
  %11439 = vmatmul.f32.gmra.mxu0 %v5037
  %v11440 = vpop.f32.mrf.mxu0
  %v11441 = vadd.f32 0.0, %v11440
  %11442 = vmatmul.f32.gmra.mxu0 %v5038
  %v11443 = vpop.f32.mrf.mxu0
  %v11444 = vadd.f32 0.0, %v11443
  %11445 = vmatmul.f32.gmra.mxu0 %v5039
  %v11446 = vpop.f32.mrf.mxu0
  %v11447 = vadd.f32 0.0, %v11446
  %11448 = vmatmul.f32.gmra.mxu0 %v5040
  %v11449 = vpop.f32.mrf.mxu0
  %v11450 = vadd.f32 0.0, %v11449
  %11451 = vmatmul.f32.gmra.mxu0 %v5041
  %v11452 = vpop.f32.mrf.mxu0
  %v11453 = vadd.f32 0.0, %v11452
  %11454 = vmatmul.f32.gmra.mxu0 %v5042
  %v11455 = vpop.f32.mrf.mxu0
  %v11456 = vadd.f32 0.0, %v11455
  %11457 = vmatmul.f32.gmra.mxu0 %v5043
  %v11458 = vpop.f32.mrf.mxu0
  %v11459 = vadd.f32 0.0, %v11458
  %11460 = vmatmul.f32.gmra.mxu0 %v5044
  %v11461 = vpop.f32.mrf.mxu0
  %v11462 = vadd.f32 0.0, %v11461
  %11463 = vmatmul.f32.gmra.mxu0 %v5049
  %v11464 = vpop.f32.mrf.mxu0
  %v11465 = vadd.f32 0.0, %v11464
  %11466 = vmatmul.f32.gmra.mxu0 %v5050
  %v11467 = vpop.f32.mrf.mxu0
  %v11468 = vadd.f32 0.0, %v11467
  %11469 = vmatmul.f32.gmra.mxu0 %v5051
  %v11470 = vpop.f32.mrf.mxu0
  %v11471 = vadd.f32 0.0, %v11470
  %11472 = vmatmul.f32.gmra.mxu0 %v5052
  %v11473 = vpop.f32.mrf.mxu0
  %v11474 = vadd.f32 0.0, %v11473
  %11475 = vmatmul.f32.gmra.mxu0 %v5053
  %v11476 = vpop.f32.mrf.mxu0
  %v11477 = vadd.f32 0.0, %v11476
  %11478 = vmatmul.f32.gmra.mxu0 %v5054
  %v11479 = vpop.f32.mrf.mxu0
  %v11480 = vadd.f32 0.0, %v11479
  %11481 = vmatmul.f32.gmra.mxu0 %v5055
  %v11482 = vpop.f32.mrf.mxu0
  %v11483 = vadd.f32 0.0, %v11482
  %11484 = vmatmul.f32.gmra.mxu0 %v5056
  %v11485 = vpop.f32.mrf.mxu0
  %v11486 = vadd.f32 0.0, %v11485
  %11487 = vmatmul.f32.gmra.mxu0 %v5061
  %v11488 = vpop.f32.mrf.mxu0
  %v11489 = vadd.f32 0.0, %v11488
  %11490 = vmatmul.f32.gmra.mxu0 %v5062
  %v11491 = vpop.f32.mrf.mxu0
  %v11492 = vadd.f32 0.0, %v11491
  %11493 = vmatmul.f32.gmra.mxu0 %v5063
  %v11494 = vpop.f32.mrf.mxu0
  %v11495 = vadd.f32 0.0, %v11494
  %11496 = vmatmul.f32.gmra.mxu0 %v5064
  %v11497 = vpop.f32.mrf.mxu0
  %v11498 = vadd.f32 0.0, %v11497
  %11499 = vmatmul.f32.gmra.mxu0 %v5065
  %v11500 = vpop.f32.mrf.mxu0
  %v11501 = vadd.f32 0.0, %v11500
  %11502 = vmatmul.f32.gmra.mxu0 %v5066
  %v11503 = vpop.f32.mrf.mxu0
  %v11504 = vadd.f32 0.0, %v11503
  %11505 = vmatmul.f32.gmra.mxu0 %v5067
  %v11506 = vpop.f32.mrf.mxu0
  %v11507 = vadd.f32 0.0, %v11506
  %11508 = vmatmul.f32.gmra.mxu0 %v5068
  %v11509 = vpop.f32.mrf.mxu0
  %v11510 = vadd.f32 0.0, %v11509
  %11511 = vmatmul.f32.gmra.mxu0 %v5073
  %v11512 = vpop.f32.mrf.mxu0
  %v11513 = vadd.f32 0.0, %v11512
  %11514 = vmatmul.f32.gmra.mxu0 %v5074
  %v11515 = vpop.f32.mrf.mxu0
  %v11516 = vadd.f32 0.0, %v11515
  %11517 = vmatmul.f32.gmra.mxu0 %v5075
  %v11518 = vpop.f32.mrf.mxu0
  %v11519 = vadd.f32 0.0, %v11518
  %11520 = vmatmul.f32.gmra.mxu0 %v5076
  %v11521 = vpop.f32.mrf.mxu0
  %v11522 = vadd.f32 0.0, %v11521
  %11523 = vmatmul.f32.gmra.mxu0 %v5077
  %v11524 = vpop.f32.mrf.mxu0
  %v11525 = vadd.f32 0.0, %v11524
  %11526 = vmatmul.f32.gmra.mxu0 %v5078
  %v11527 = vpop.f32.mrf.mxu0
  %v11528 = vadd.f32 0.0, %v11527
  %11529 = vmatmul.f32.gmra.mxu0 %v5079
  %v11530 = vpop.f32.mrf.mxu0
  %v11531 = vadd.f32 0.0, %v11530
  %11532 = vmatmul.f32.gmra.mxu0 %v5080
  %v11533 = vpop.f32.mrf.mxu0
  %v11534 = vadd.f32 0.0, %v11533
  %11535 = vmatmul.f32.gmra.mxu0 %v5085
  %v11536 = vpop.f32.mrf.mxu0
  %v11537 = vadd.f32 0.0, %v11536
  %11538 = vmatmul.f32.gmra.mxu0 %v5086
  %v11539 = vpop.f32.mrf.mxu0
  %v11540 = vadd.f32 0.0, %v11539
  %11541 = vmatmul.f32.gmra.mxu0 %v5087
  %v11542 = vpop.f32.mrf.mxu0
  %v11543 = vadd.f32 0.0, %v11542
  %11544 = vmatmul.f32.gmra.mxu0 %v5088
  %v11545 = vpop.f32.mrf.mxu0
  %v11546 = vadd.f32 0.0, %v11545
  %11547 = vmatmul.f32.gmra.mxu0 %v5089
  %v11548 = vpop.f32.mrf.mxu0
  %v11549 = vadd.f32 0.0, %v11548
  %11550 = vmatmul.f32.gmra.mxu0 %v5090
  %v11551 = vpop.f32.mrf.mxu0
  %v11552 = vadd.f32 0.0, %v11551
  %11553 = vmatmul.f32.gmra.mxu0 %v5091
  %v11554 = vpop.f32.mrf.mxu0
  %v11555 = vadd.f32 0.0, %v11554
  %11556 = vmatmul.f32.gmra.mxu0 %v5092
  %v11557 = vpop.f32.mrf.mxu0
  %v11558 = vadd.f32 0.0, %v11557
  %11559 = vmatmul.f32.gmra.mxu0 %v5097
  %v11560 = vpop.f32.mrf.mxu0
  %v11561 = vadd.f32 0.0, %v11560
  %11562 = vmatmul.f32.gmra.mxu0 %v5098
  %v11563 = vpop.f32.mrf.mxu0
  %v11564 = vadd.f32 0.0, %v11563
  %11565 = vmatmul.f32.gmra.mxu0 %v5099
  %v11566 = vpop.f32.mrf.mxu0
  %v11567 = vadd.f32 0.0, %v11566
  %11568 = vmatmul.f32.gmra.mxu0 %v5100
  %v11569 = vpop.f32.mrf.mxu0
  %v11570 = vadd.f32 0.0, %v11569
  %11571 = vmatmul.f32.gmra.mxu0 %v5101
  %v11572 = vpop.f32.mrf.mxu0
  %v11573 = vadd.f32 0.0, %v11572
  %11574 = vmatmul.f32.gmra.mxu0 %v5102
  %v11575 = vpop.f32.mrf.mxu0
  %v11576 = vadd.f32 0.0, %v11575
  %11577 = vmatmul.f32.gmra.mxu0 %v5103
  %v11578 = vpop.f32.mrf.mxu0
  %v11579 = vadd.f32 0.0, %v11578
  %11580 = vmatmul.f32.gmra.mxu0 %v5104
  %v11581 = vpop.f32.mrf.mxu0
  %v11582 = vadd.f32 0.0, %v11581
  %11583 = vdwg.mxu0
  %v11584 = vadd.f32 %v11294, %v11393
  %v11585 = vadd.f32 %v11295, %v11396
  %v11586 = vadd.f32 %v11296, %v11399
  %v11587 = vadd.f32 %v11297, %v11402
  %v11588 = vadd.f32 %v11298, %v11405
  %v11589 = vadd.f32 %v11299, %v11408
  %v11590 = vadd.f32 %v11300, %v11411
  %v11591 = vadd.f32 %v11301, %v11414
  %v11592 = vadd.f32 %v11302, %v11417
  %v11593 = vadd.f32 %v11303, %v11420
  %v11594 = vadd.f32 %v11304, %v11423
  %v11595 = vadd.f32 %v11305, %v11426
  %v11596 = vadd.f32 %v11306, %v11429
  %v11597 = vadd.f32 %v11307, %v11432
  %v11598 = vadd.f32 %v11308, %v11435
  %v11599 = vadd.f32 %v11309, %v11438
  %v11600 = vadd.f32 %v11310, %v11441
  %v11601 = vadd.f32 %v11311, %v11444
  %v11602 = vadd.f32 %v11312, %v11447
  %v11603 = vadd.f32 %v11313, %v11450
  %v11604 = vadd.f32 %v11314, %v11453
  %v11605 = vadd.f32 %v11315, %v11456
  %v11606 = vadd.f32 %v11316, %v11459
  %v11607 = vadd.f32 %v11317, %v11462
  %v11608 = vadd.f32 %v11318, %v11465
  %v11609 = vadd.f32 %v11319, %v11468
  %v11610 = vadd.f32 %v11320, %v11471
  %v11611 = vadd.f32 %v11321, %v11474
  %v11612 = vadd.f32 %v11322, %v11477
  %v11613 = vadd.f32 %v11323, %v11480
  %v11614 = vadd.f32 %v11324, %v11483
  %v11615 = vadd.f32 %v11325, %v11486
  %v11616 = vadd.f32 %v11326, %v11489
  %v11617 = vadd.f32 %v11327, %v11492
  %v11618 = vadd.f32 %v11328, %v11495
  %v11619 = vadd.f32 %v11329, %v11498
  %v11620 = vadd.f32 %v11330, %v11501
  %v11621 = vadd.f32 %v11331, %v11504
  %v11622 = vadd.f32 %v11332, %v11507
  %v11623 = vadd.f32 %v11333, %v11510
  %v11624 = vadd.f32 %v11334, %v11513
  %v11625 = vadd.f32 %v11335, %v11516
  %v11626 = vadd.f32 %v11336, %v11519
  %v11627 = vadd.f32 %v11337, %v11522
  %v11628 = vadd.f32 %v11338, %v11525
  %v11629 = vadd.f32 %v11339, %v11528
  %v11630 = vadd.f32 %v11340, %v11531
  %v11631 = vadd.f32 %v11341, %v11534
  %v11632 = vadd.f32 %v11342, %v11537
  %v11633 = vadd.f32 %v11343, %v11540
  %v11634 = vadd.f32 %v11344, %v11543
  %v11635 = vadd.f32 %v11345, %v11546
  %v11636 = vadd.f32 %v11346, %v11549
  %v11637 = vadd.f32 %v11347, %v11552
  %v11638 = vadd.f32 %v11348, %v11555
  %v11639 = vadd.f32 %v11349, %v11558
  %v11640 = vadd.f32 %v11350, %v11561
  %v11641 = vadd.f32 %v11351, %v11564
  %v11642 = vadd.f32 %v11352, %v11567
  %v11643 = vadd.f32 %v11353, %v11570
  %v11644 = vadd.f32 %v11354, %v11573
  %v11645 = vadd.f32 %v11355, %v11576
  %v11646 = vadd.f32 %v11356, %v11579
  %v11647 = vadd.f32 %v11357, %v11582
  %s11648 = scalar_lea.vmem %s4, 2944
  %v11649 = vld [vmem:[%s11648] sm:$0xff]
  %v11650 = vld [vmem:[%s11648 + $0x8] sm:$0xff]
  %v11651 = vld [vmem:[%s11648 + $0x10] sm:$0xff]
  %v11652 = vld [vmem:[%s11648 + $0x18] sm:$0xff]
  %v11653 = vld [vmem:[%s11648 + $0x20] sm:$0xff]
  %v11654 = vld [vmem:[%s11648 + $0x28] sm:$0xff]
  %v11655 = vld [vmem:[%s11648 + $0x30] sm:$0xff]
  %v11656 = vld [vmem:[%s11648 + $0x38] sm:$0xff]
  %v11657 = vld [vmem:[%s11648 + $0x40] sm:$0xff]
  %v11658 = vld [vmem:[%s11648 + $0x48] sm:$0xff]
  %v11659 = vld [vmem:[%s11648 + $0x50] sm:$0xff]
  %v11660 = vld [vmem:[%s11648 + $0x58] sm:$0xff]
  %v11661 = vld [vmem:[%s11648 + $0x60] sm:$0xff]
  %v11662 = vld [vmem:[%s11648 + $0x68] sm:$0xff]
  %v11663 = vld [vmem:[%s11648 + $0x70] sm:$0xff]
  %v11664 = vld [vmem:[%s11648 + $0x78] sm:$0xff]
  %11665 = vmatpush.msra.mxu0 %v11664
  %11666 = vmatpush.msra.mxu0 %v11663
  %11667 = vmatpush.msra.mxu0 %v11662
  %11668 = vmatpush.msra.mxu0 %v11661
  %11669 = vmatpush.msra.mxu0 %v11660
  %11670 = vmatpush.msra.mxu0 %v11659
  %11671 = vmatpush.msra.mxu0 %v11658
  %11672 = vmatpush.msra.mxu0 %v11657
  %11673 = vmatpush.msra.mxu0 %v11656
  %11674 = vmatpush.msra.mxu0 %v11655
  %11675 = vmatpush.msra.mxu0 %v11654
  %11676 = vmatpush.msra.mxu0 %v11653
  %11677 = vmatpush.msra.mxu0 %v11652
  %11678 = vmatpush.msra.mxu0 %v11651
  %11679 = vmatpush.msra.mxu0 %v11650
  %11680 = vmatpush.msra.mxu0 %v11649
  %11681 = vmatmul.f32.gmra.mxu0 %v5014
  %v11682 = vpop.f32.mrf.mxu0
  %v11683 = vadd.f32 0.0, %v11682
  %11684 = vmatmul.f32.gmra.mxu0 %v5015
  %v11685 = vpop.f32.mrf.mxu0
  %v11686 = vadd.f32 0.0, %v11685
  %11687 = vmatmul.f32.gmra.mxu0 %v5016
  %v11688 = vpop.f32.mrf.mxu0
  %v11689 = vadd.f32 0.0, %v11688
  %11690 = vmatmul.f32.gmra.mxu0 %v5017
  %v11691 = vpop.f32.mrf.mxu0
  %v11692 = vadd.f32 0.0, %v11691
  %11693 = vmatmul.f32.gmra.mxu0 %v5018
  %v11694 = vpop.f32.mrf.mxu0
  %v11695 = vadd.f32 0.0, %v11694
  %11696 = vmatmul.f32.gmra.mxu0 %v5019
  %v11697 = vpop.f32.mrf.mxu0
  %v11698 = vadd.f32 0.0, %v11697
  %11699 = vmatmul.f32.gmra.mxu0 %v5020
  %v11700 = vpop.f32.mrf.mxu0
  %v11701 = vadd.f32 0.0, %v11700
  %11702 = vmatmul.f32.gmra.mxu0 %v5021
  %v11703 = vpop.f32.mrf.mxu0
  %v11704 = vadd.f32 0.0, %v11703
  %11705 = vmatmul.f32.gmra.mxu0 %v5026
  %v11706 = vpop.f32.mrf.mxu0
  %v11707 = vadd.f32 0.0, %v11706
  %11708 = vmatmul.f32.gmra.mxu0 %v5027
  %v11709 = vpop.f32.mrf.mxu0
  %v11710 = vadd.f32 0.0, %v11709
  %11711 = vmatmul.f32.gmra.mxu0 %v5028
  %v11712 = vpop.f32.mrf.mxu0
  %v11713 = vadd.f32 0.0, %v11712
  %11714 = vmatmul.f32.gmra.mxu0 %v5029
  %v11715 = vpop.f32.mrf.mxu0
  %v11716 = vadd.f32 0.0, %v11715
  %11717 = vmatmul.f32.gmra.mxu0 %v5030
  %v11718 = vpop.f32.mrf.mxu0
  %v11719 = vadd.f32 0.0, %v11718
  %11720 = vmatmul.f32.gmra.mxu0 %v5031
  %v11721 = vpop.f32.mrf.mxu0
  %v11722 = vadd.f32 0.0, %v11721
  %11723 = vmatmul.f32.gmra.mxu0 %v5032
  %v11724 = vpop.f32.mrf.mxu0
  %v11725 = vadd.f32 0.0, %v11724
  %11726 = vmatmul.f32.gmra.mxu0 %v5033
  %v11727 = vpop.f32.mrf.mxu0
  %v11728 = vadd.f32 0.0, %v11727
  %11729 = vmatmul.f32.gmra.mxu0 %v5038
  %v11730 = vpop.f32.mrf.mxu0
  %v11731 = vadd.f32 0.0, %v11730
  %11732 = vmatmul.f32.gmra.mxu0 %v5039
  %v11733 = vpop.f32.mrf.mxu0
  %v11734 = vadd.f32 0.0, %v11733
  %11735 = vmatmul.f32.gmra.mxu0 %v5040
  %v11736 = vpop.f32.mrf.mxu0
  %v11737 = vadd.f32 0.0, %v11736
  %11738 = vmatmul.f32.gmra.mxu0 %v5041
  %v11739 = vpop.f32.mrf.mxu0
  %v11740 = vadd.f32 0.0, %v11739
  %11741 = vmatmul.f32.gmra.mxu0 %v5042
  %v11742 = vpop.f32.mrf.mxu0
  %v11743 = vadd.f32 0.0, %v11742
  %11744 = vmatmul.f32.gmra.mxu0 %v5043
  %v11745 = vpop.f32.mrf.mxu0
  %v11746 = vadd.f32 0.0, %v11745
  %11747 = vmatmul.f32.gmra.mxu0 %v5044
  %v11748 = vpop.f32.mrf.mxu0
  %v11749 = vadd.f32 0.0, %v11748
  %11750 = vmatmul.f32.gmra.mxu0 %v5045
  %v11751 = vpop.f32.mrf.mxu0
  %v11752 = vadd.f32 0.0, %v11751
  %11753 = vmatmul.f32.gmra.mxu0 %v5050
  %v11754 = vpop.f32.mrf.mxu0
  %v11755 = vadd.f32 0.0, %v11754
  %11756 = vmatmul.f32.gmra.mxu0 %v5051
  %v11757 = vpop.f32.mrf.mxu0
  %v11758 = vadd.f32 0.0, %v11757
  %11759 = vmatmul.f32.gmra.mxu0 %v5052
  %v11760 = vpop.f32.mrf.mxu0
  %v11761 = vadd.f32 0.0, %v11760
  %11762 = vmatmul.f32.gmra.mxu0 %v5053
  %v11763 = vpop.f32.mrf.mxu0
  %v11764 = vadd.f32 0.0, %v11763
  %11765 = vmatmul.f32.gmra.mxu0 %v5054
  %v11766 = vpop.f32.mrf.mxu0
  %v11767 = vadd.f32 0.0, %v11766
  %11768 = vmatmul.f32.gmra.mxu0 %v5055
  %v11769 = vpop.f32.mrf.mxu0
  %v11770 = vadd.f32 0.0, %v11769
  %11771 = vmatmul.f32.gmra.mxu0 %v5056
  %v11772 = vpop.f32.mrf.mxu0
  %v11773 = vadd.f32 0.0, %v11772
  %11774 = vmatmul.f32.gmra.mxu0 %v5057
  %v11775 = vpop.f32.mrf.mxu0
  %v11776 = vadd.f32 0.0, %v11775
  %11777 = vmatmul.f32.gmra.mxu0 %v5062
  %v11778 = vpop.f32.mrf.mxu0
  %v11779 = vadd.f32 0.0, %v11778
  %11780 = vmatmul.f32.gmra.mxu0 %v5063
  %v11781 = vpop.f32.mrf.mxu0
  %v11782 = vadd.f32 0.0, %v11781
  %11783 = vmatmul.f32.gmra.mxu0 %v5064
  %v11784 = vpop.f32.mrf.mxu0
  %v11785 = vadd.f32 0.0, %v11784
  %11786 = vmatmul.f32.gmra.mxu0 %v5065
  %v11787 = vpop.f32.mrf.mxu0
  %v11788 = vadd.f32 0.0, %v11787
  %11789 = vmatmul.f32.gmra.mxu0 %v5066
  %v11790 = vpop.f32.mrf.mxu0
  %v11791 = vadd.f32 0.0, %v11790
  %11792 = vmatmul.f32.gmra.mxu0 %v5067
  %v11793 = vpop.f32.mrf.mxu0
  %v11794 = vadd.f32 0.0, %v11793
  %11795 = vmatmul.f32.gmra.mxu0 %v5068
  %v11796 = vpop.f32.mrf.mxu0
  %v11797 = vadd.f32 0.0, %v11796
  %11798 = vmatmul.f32.gmra.mxu0 %v5069
  %v11799 = vpop.f32.mrf.mxu0
  %v11800 = vadd.f32 0.0, %v11799
  %11801 = vmatmul.f32.gmra.mxu0 %v5074
  %v11802 = vpop.f32.mrf.mxu0
  %v11803 = vadd.f32 0.0, %v11802
  %11804 = vmatmul.f32.gmra.mxu0 %v5075
  %v11805 = vpop.f32.mrf.mxu0
  %v11806 = vadd.f32 0.0, %v11805
  %11807 = vmatmul.f32.gmra.mxu0 %v5076
  %v11808 = vpop.f32.mrf.mxu0
  %v11809 = vadd.f32 0.0, %v11808
  %11810 = vmatmul.f32.gmra.mxu0 %v5077
  %v11811 = vpop.f32.mrf.mxu0
  %v11812 = vadd.f32 0.0, %v11811
  %11813 = vmatmul.f32.gmra.mxu0 %v5078
  %v11814 = vpop.f32.mrf.mxu0
  %v11815 = vadd.f32 0.0, %v11814
  %11816 = vmatmul.f32.gmra.mxu0 %v5079
  %v11817 = vpop.f32.mrf.mxu0
  %v11818 = vadd.f32 0.0, %v11817
  %11819 = vmatmul.f32.gmra.mxu0 %v5080
  %v11820 = vpop.f32.mrf.mxu0
  %v11821 = vadd.f32 0.0, %v11820
  %11822 = vmatmul.f32.gmra.mxu0 %v5081
  %v11823 = vpop.f32.mrf.mxu0
  %v11824 = vadd.f32 0.0, %v11823
  %11825 = vmatmul.f32.gmra.mxu0 %v5086
  %v11826 = vpop.f32.mrf.mxu0
  %v11827 = vadd.f32 0.0, %v11826
  %11828 = vmatmul.f32.gmra.mxu0 %v5087
  %v11829 = vpop.f32.mrf.mxu0
  %v11830 = vadd.f32 0.0, %v11829
  %11831 = vmatmul.f32.gmra.mxu0 %v5088
  %v11832 = vpop.f32.mrf.mxu0
  %v11833 = vadd.f32 0.0, %v11832
  %11834 = vmatmul.f32.gmra.mxu0 %v5089
  %v11835 = vpop.f32.mrf.mxu0
  %v11836 = vadd.f32 0.0, %v11835
  %11837 = vmatmul.f32.gmra.mxu0 %v5090
  %v11838 = vpop.f32.mrf.mxu0
  %v11839 = vadd.f32 0.0, %v11838
  %11840 = vmatmul.f32.gmra.mxu0 %v5091
  %v11841 = vpop.f32.mrf.mxu0
  %v11842 = vadd.f32 0.0, %v11841
  %11843 = vmatmul.f32.gmra.mxu0 %v5092
  %v11844 = vpop.f32.mrf.mxu0
  %v11845 = vadd.f32 0.0, %v11844
  %11846 = vmatmul.f32.gmra.mxu0 %v5093
  %v11847 = vpop.f32.mrf.mxu0
  %v11848 = vadd.f32 0.0, %v11847
  %11849 = vmatmul.f32.gmra.mxu0 %v5098
  %v11850 = vpop.f32.mrf.mxu0
  %v11851 = vadd.f32 0.0, %v11850
  %11852 = vmatmul.f32.gmra.mxu0 %v5099
  %v11853 = vpop.f32.mrf.mxu0
  %v11854 = vadd.f32 0.0, %v11853
  %11855 = vmatmul.f32.gmra.mxu0 %v5100
  %v11856 = vpop.f32.mrf.mxu0
  %v11857 = vadd.f32 0.0, %v11856
  %11858 = vmatmul.f32.gmra.mxu0 %v5101
  %v11859 = vpop.f32.mrf.mxu0
  %v11860 = vadd.f32 0.0, %v11859
  %11861 = vmatmul.f32.gmra.mxu0 %v5102
  %v11862 = vpop.f32.mrf.mxu0
  %v11863 = vadd.f32 0.0, %v11862
  %11864 = vmatmul.f32.gmra.mxu0 %v5103
  %v11865 = vpop.f32.mrf.mxu0
  %v11866 = vadd.f32 0.0, %v11865
  %11867 = vmatmul.f32.gmra.mxu0 %v5104
  %v11868 = vpop.f32.mrf.mxu0
  %v11869 = vadd.f32 0.0, %v11868
  %11870 = vmatmul.f32.gmra.mxu0 %v5105
  %v11871 = vpop.f32.mrf.mxu0
  %v11872 = vadd.f32 0.0, %v11871
  %11873 = vdwg.mxu0
  %v11874 = vadd.f32 %v11584, %v11683
  %v11875 = vadd.f32 %v11585, %v11686
  %v11876 = vadd.f32 %v11586, %v11689
  %v11877 = vadd.f32 %v11587, %v11692
  %v11878 = vadd.f32 %v11588, %v11695
  %v11879 = vadd.f32 %v11589, %v11698
  %v11880 = vadd.f32 %v11590, %v11701
  %v11881 = vadd.f32 %v11591, %v11704
  %v11882 = vadd.f32 %v11592, %v11707
  %v11883 = vadd.f32 %v11593, %v11710
  %v11884 = vadd.f32 %v11594, %v11713
  %v11885 = vadd.f32 %v11595, %v11716
  %v11886 = vadd.f32 %v11596, %v11719
  %v11887 = vadd.f32 %v11597, %v11722
  %v11888 = vadd.f32 %v11598, %v11725
  %v11889 = vadd.f32 %v11599, %v11728
  %v11890 = vadd.f32 %v11600, %v11731
  %v11891 = vadd.f32 %v11601, %v11734
  %v11892 = vadd.f32 %v11602, %v11737
  %v11893 = vadd.f32 %v11603, %v11740
  %v11894 = vadd.f32 %v11604, %v11743
  %v11895 = vadd.f32 %v11605, %v11746
  %v11896 = vadd.f32 %v11606, %v11749
  %v11897 = vadd.f32 %v11607, %v11752
  %v11898 = vadd.f32 %v11608, %v11755
  %v11899 = vadd.f32 %v11609, %v11758
  %v11900 = vadd.f32 %v11610, %v11761
  %v11901 = vadd.f32 %v11611, %v11764
  %v11902 = vadd.f32 %v11612, %v11767
  %v11903 = vadd.f32 %v11613, %v11770
  %v11904 = vadd.f32 %v11614, %v11773
  %v11905 = vadd.f32 %v11615, %v11776
  %v11906 = vadd.f32 %v11616, %v11779
  %v11907 = vadd.f32 %v11617, %v11782
  %v11908 = vadd.f32 %v11618, %v11785
  %v11909 = vadd.f32 %v11619, %v11788
  %v11910 = vadd.f32 %v11620, %v11791
  %v11911 = vadd.f32 %v11621, %v11794
  %v11912 = vadd.f32 %v11622, %v11797
  %v11913 = vadd.f32 %v11623, %v11800
  %v11914 = vadd.f32 %v11624, %v11803
  %v11915 = vadd.f32 %v11625, %v11806
  %v11916 = vadd.f32 %v11626, %v11809
  %v11917 = vadd.f32 %v11627, %v11812
  %v11918 = vadd.f32 %v11628, %v11815
  %v11919 = vadd.f32 %v11629, %v11818
  %v11920 = vadd.f32 %v11630, %v11821
  %v11921 = vadd.f32 %v11631, %v11824
  %v11922 = vadd.f32 %v11632, %v11827
  %v11923 = vadd.f32 %v11633, %v11830
  %v11924 = vadd.f32 %v11634, %v11833
  %v11925 = vadd.f32 %v11635, %v11836
  %v11926 = vadd.f32 %v11636, %v11839
  %v11927 = vadd.f32 %v11637, %v11842
  %v11928 = vadd.f32 %v11638, %v11845
  %v11929 = vadd.f32 %v11639, %v11848
  %v11930 = vadd.f32 %v11640, %v11851
  %v11931 = vadd.f32 %v11641, %v11854
  %v11932 = vadd.f32 %v11642, %v11857
  %v11933 = vadd.f32 %v11643, %v11860
  %v11934 = vadd.f32 %v11644, %v11863
  %v11935 = vadd.f32 %v11645, %v11866
  %v11936 = vadd.f32 %v11646, %v11869
  %v11937 = vadd.f32 %v11647, %v11872
  %s11938 = scalar_lea.vmem %s4, 3072
  %v11939 = vld [vmem:[%s11938] sm:$0xff]
  %v11940 = vld [vmem:[%s11938 + $0x8] sm:$0xff]
  %v11941 = vld [vmem:[%s11938 + $0x10] sm:$0xff]
  %v11942 = vld [vmem:[%s11938 + $0x18] sm:$0xff]
  %v11943 = vld [vmem:[%s11938 + $0x20] sm:$0xff]
  %v11944 = vld [vmem:[%s11938 + $0x28] sm:$0xff]
  %v11945 = vld [vmem:[%s11938 + $0x30] sm:$0xff]
  %v11946 = vld [vmem:[%s11938 + $0x38] sm:$0xff]
  %v11947 = vld [vmem:[%s11938 + $0x40] sm:$0xff]
  %v11948 = vld [vmem:[%s11938 + $0x48] sm:$0xff]
  %v11949 = vld [vmem:[%s11938 + $0x50] sm:$0xff]
  %v11950 = vld [vmem:[%s11938 + $0x58] sm:$0xff]
  %v11951 = vld [vmem:[%s11938 + $0x60] sm:$0xff]
  %v11952 = vld [vmem:[%s11938 + $0x68] sm:$0xff]
  %v11953 = vld [vmem:[%s11938 + $0x70] sm:$0xff]
  %v11954 = vld [vmem:[%s11938 + $0x78] sm:$0xff]
  %11955 = vmatpush.msra.mxu0 %v11954
  %11956 = vmatpush.msra.mxu0 %v11953
  %11957 = vmatpush.msra.mxu0 %v11952
  %11958 = vmatpush.msra.mxu0 %v11951
  %11959 = vmatpush.msra.mxu0 %v11950
  %11960 = vmatpush.msra.mxu0 %v11949
  %11961 = vmatpush.msra.mxu0 %v11948
  %11962 = vmatpush.msra.mxu0 %v11947
  %11963 = vmatpush.msra.mxu0 %v11946
  %11964 = vmatpush.msra.mxu0 %v11945
  %11965 = vmatpush.msra.mxu0 %v11944
  %11966 = vmatpush.msra.mxu0 %v11943
  %11967 = vmatpush.msra.mxu0 %v11942
  %11968 = vmatpush.msra.mxu0 %v11941
  %11969 = vmatpush.msra.mxu0 %v11940
  %11970 = vmatpush.msra.mxu0 %v11939
  %11971 = vmatmul.f32.gmra.mxu0 %v5015
  %v11972 = vpop.f32.mrf.mxu0
  %v11973 = vadd.f32 0.0, %v11972
  %11974 = vmatmul.f32.gmra.mxu0 %v5016
  %v11975 = vpop.f32.mrf.mxu0
  %v11976 = vadd.f32 0.0, %v11975
  %11977 = vmatmul.f32.gmra.mxu0 %v5017
  %v11978 = vpop.f32.mrf.mxu0
  %v11979 = vadd.f32 0.0, %v11978
  %11980 = vmatmul.f32.gmra.mxu0 %v5018
  %v11981 = vpop.f32.mrf.mxu0
  %v11982 = vadd.f32 0.0, %v11981
  %11983 = vmatmul.f32.gmra.mxu0 %v5019
  %v11984 = vpop.f32.mrf.mxu0
  %v11985 = vadd.f32 0.0, %v11984
  %11986 = vmatmul.f32.gmra.mxu0 %v5020
  %v11987 = vpop.f32.mrf.mxu0
  %v11988 = vadd.f32 0.0, %v11987
  %11989 = vmatmul.f32.gmra.mxu0 %v5021
  %v11990 = vpop.f32.mrf.mxu0
  %v11991 = vadd.f32 0.0, %v11990
  %11992 = vmatmul.f32.gmra.mxu0 %v5022
  %v11993 = vpop.f32.mrf.mxu0
  %v11994 = vadd.f32 0.0, %v11993
  %11995 = vmatmul.f32.gmra.mxu0 %v5027
  %v11996 = vpop.f32.mrf.mxu0
  %v11997 = vadd.f32 0.0, %v11996
  %11998 = vmatmul.f32.gmra.mxu0 %v5028
  %v11999 = vpop.f32.mrf.mxu0
  %v12000 = vadd.f32 0.0, %v11999
  %12001 = vmatmul.f32.gmra.mxu0 %v5029
  %v12002 = vpop.f32.mrf.mxu0
  %v12003 = vadd.f32 0.0, %v12002
  %12004 = vmatmul.f32.gmra.mxu0 %v5030
  %v12005 = vpop.f32.mrf.mxu0
  %v12006 = vadd.f32 0.0, %v12005
  %12007 = vmatmul.f32.gmra.mxu0 %v5031
  %v12008 = vpop.f32.mrf.mxu0
  %v12009 = vadd.f32 0.0, %v12008
  %12010 = vmatmul.f32.gmra.mxu0 %v5032
  %v12011 = vpop.f32.mrf.mxu0
  %v12012 = vadd.f32 0.0, %v12011
  %12013 = vmatmul.f32.gmra.mxu0 %v5033
  %v12014 = vpop.f32.mrf.mxu0
  %v12015 = vadd.f32 0.0, %v12014
  %12016 = vmatmul.f32.gmra.mxu0 %v5034
  %v12017 = vpop.f32.mrf.mxu0
  %v12018 = vadd.f32 0.0, %v12017
  %12019 = vmatmul.f32.gmra.mxu0 %v5039
  %v12020 = vpop.f32.mrf.mxu0
  %v12021 = vadd.f32 0.0, %v12020
  %12022 = vmatmul.f32.gmra.mxu0 %v5040
  %v12023 = vpop.f32.mrf.mxu0
  %v12024 = vadd.f32 0.0, %v12023
  %12025 = vmatmul.f32.gmra.mxu0 %v5041
  %v12026 = vpop.f32.mrf.mxu0
  %v12027 = vadd.f32 0.0, %v12026
  %12028 = vmatmul.f32.gmra.mxu0 %v5042
  %v12029 = vpop.f32.mrf.mxu0
  %v12030 = vadd.f32 0.0, %v12029
  %12031 = vmatmul.f32.gmra.mxu0 %v5043
  %v12032 = vpop.f32.mrf.mxu0
  %v12033 = vadd.f32 0.0, %v12032
  %12034 = vmatmul.f32.gmra.mxu0 %v5044
  %v12035 = vpop.f32.mrf.mxu0
  %v12036 = vadd.f32 0.0, %v12035
  %12037 = vmatmul.f32.gmra.mxu0 %v5045
  %v12038 = vpop.f32.mrf.mxu0
  %v12039 = vadd.f32 0.0, %v12038
  %12040 = vmatmul.f32.gmra.mxu0 %v5046
  %v12041 = vpop.f32.mrf.mxu0
  %v12042 = vadd.f32 0.0, %v12041
  %12043 = vmatmul.f32.gmra.mxu0 %v5051
  %v12044 = vpop.f32.mrf.mxu0
  %v12045 = vadd.f32 0.0, %v12044
  %12046 = vmatmul.f32.gmra.mxu0 %v5052
  %v12047 = vpop.f32.mrf.mxu0
  %v12048 = vadd.f32 0.0, %v12047
  %12049 = vmatmul.f32.gmra.mxu0 %v5053
  %v12050 = vpop.f32.mrf.mxu0
  %v12051 = vadd.f32 0.0, %v12050
  %12052 = vmatmul.f32.gmra.mxu0 %v5054
  %v12053 = vpop.f32.mrf.mxu0
  %v12054 = vadd.f32 0.0, %v12053
  %12055 = vmatmul.f32.gmra.mxu0 %v5055
  %v12056 = vpop.f32.mrf.mxu0
  %v12057 = vadd.f32 0.0, %v12056
  %12058 = vmatmul.f32.gmra.mxu0 %v5056
  %v12059 = vpop.f32.mrf.mxu0
  %v12060 = vadd.f32 0.0, %v12059
  %12061 = vmatmul.f32.gmra.mxu0 %v5057
  %v12062 = vpop.f32.mrf.mxu0
  %v12063 = vadd.f32 0.0, %v12062
  %12064 = vmatmul.f32.gmra.mxu0 %v5058
  %v12065 = vpop.f32.mrf.mxu0
  %v12066 = vadd.f32 0.0, %v12065
  %12067 = vmatmul.f32.gmra.mxu0 %v5063
  %v12068 = vpop.f32.mrf.mxu0
  %v12069 = vadd.f32 0.0, %v12068
  %12070 = vmatmul.f32.gmra.mxu0 %v5064
  %v12071 = vpop.f32.mrf.mxu0
  %v12072 = vadd.f32 0.0, %v12071
  %12073 = vmatmul.f32.gmra.mxu0 %v5065
  %v12074 = vpop.f32.mrf.mxu0
  %v12075 = vadd.f32 0.0, %v12074
  %12076 = vmatmul.f32.gmra.mxu0 %v5066
  %v12077 = vpop.f32.mrf.mxu0
  %v12078 = vadd.f32 0.0, %v12077
  %12079 = vmatmul.f32.gmra.mxu0 %v5067
  %v12080 = vpop.f32.mrf.mxu0
  %v12081 = vadd.f32 0.0, %v12080
  %12082 = vmatmul.f32.gmra.mxu0 %v5068
  %v12083 = vpop.f32.mrf.mxu0
  %v12084 = vadd.f32 0.0, %v12083
  %12085 = vmatmul.f32.gmra.mxu0 %v5069
  %v12086 = vpop.f32.mrf.mxu0
  %v12087 = vadd.f32 0.0, %v12086
  %12088 = vmatmul.f32.gmra.mxu0 %v5070
  %v12089 = vpop.f32.mrf.mxu0
  %v12090 = vadd.f32 0.0, %v12089
  %12091 = vmatmul.f32.gmra.mxu0 %v5075
  %v12092 = vpop.f32.mrf.mxu0
  %v12093 = vadd.f32 0.0, %v12092
  %12094 = vmatmul.f32.gmra.mxu0 %v5076
  %v12095 = vpop.f32.mrf.mxu0
  %v12096 = vadd.f32 0.0, %v12095
  %12097 = vmatmul.f32.gmra.mxu0 %v5077
  %v12098 = vpop.f32.mrf.mxu0
  %v12099 = vadd.f32 0.0, %v12098
  %12100 = vmatmul.f32.gmra.mxu0 %v5078
  %v12101 = vpop.f32.mrf.mxu0
  %v12102 = vadd.f32 0.0, %v12101
  %12103 = vmatmul.f32.gmra.mxu0 %v5079
  %v12104 = vpop.f32.mrf.mxu0
  %v12105 = vadd.f32 0.0, %v12104
  %12106 = vmatmul.f32.gmra.mxu0 %v5080
  %v12107 = vpop.f32.mrf.mxu0
  %v12108 = vadd.f32 0.0, %v12107
  %12109 = vmatmul.f32.gmra.mxu0 %v5081
  %v12110 = vpop.f32.mrf.mxu0
  %v12111 = vadd.f32 0.0, %v12110
  %12112 = vmatmul.f32.gmra.mxu0 %v5082
  %v12113 = vpop.f32.mrf.mxu0
  %v12114 = vadd.f32 0.0, %v12113
  %12115 = vmatmul.f32.gmra.mxu0 %v5087
  %v12116 = vpop.f32.mrf.mxu0
  %v12117 = vadd.f32 0.0, %v12116
  %12118 = vmatmul.f32.gmra.mxu0 %v5088
  %v12119 = vpop.f32.mrf.mxu0
  %v12120 = vadd.f32 0.0, %v12119
  %12121 = vmatmul.f32.gmra.mxu0 %v5089
  %v12122 = vpop.f32.mrf.mxu0
  %v12123 = vadd.f32 0.0, %v12122
  %12124 = vmatmul.f32.gmra.mxu0 %v5090
  %v12125 = vpop.f32.mrf.mxu0
  %v12126 = vadd.f32 0.0, %v12125
  %12127 = vmatmul.f32.gmra.mxu0 %v5091
  %v12128 = vpop.f32.mrf.mxu0
  %v12129 = vadd.f32 0.0, %v12128
  %12130 = vmatmul.f32.gmra.mxu0 %v5092
  %v12131 = vpop.f32.mrf.mxu0
  %v12132 = vadd.f32 0.0, %v12131
  %12133 = vmatmul.f32.gmra.mxu0 %v5093
  %v12134 = vpop.f32.mrf.mxu0
  %v12135 = vadd.f32 0.0, %v12134
  %12136 = vmatmul.f32.gmra.mxu0 %v5094
  %v12137 = vpop.f32.mrf.mxu0
  %v12138 = vadd.f32 0.0, %v12137
  %12139 = vmatmul.f32.gmra.mxu0 %v5099
  %v12140 = vpop.f32.mrf.mxu0
  %v12141 = vadd.f32 0.0, %v12140
  %12142 = vmatmul.f32.gmra.mxu0 %v5100
  %v12143 = vpop.f32.mrf.mxu0
  %v12144 = vadd.f32 0.0, %v12143
  %12145 = vmatmul.f32.gmra.mxu0 %v5101
  %v12146 = vpop.f32.mrf.mxu0
  %v12147 = vadd.f32 0.0, %v12146
  %12148 = vmatmul.f32.gmra.mxu0 %v5102
  %v12149 = vpop.f32.mrf.mxu0
  %v12150 = vadd.f32 0.0, %v12149
  %12151 = vmatmul.f32.gmra.mxu0 %v5103
  %v12152 = vpop.f32.mrf.mxu0
  %v12153 = vadd.f32 0.0, %v12152
  %12154 = vmatmul.f32.gmra.mxu0 %v5104
  %v12155 = vpop.f32.mrf.mxu0
  %v12156 = vadd.f32 0.0, %v12155
  %12157 = vmatmul.f32.gmra.mxu0 %v5105
  %v12158 = vpop.f32.mrf.mxu0
  %v12159 = vadd.f32 0.0, %v12158
  %12160 = vmatmul.f32.gmra.mxu0 %v5106
  %v12161 = vpop.f32.mrf.mxu0
  %v12162 = vadd.f32 0.0, %v12161
  %12163 = vdwg.mxu0
  %v12164 = vadd.f32 %v11874, %v11973
  %v12165 = vadd.f32 %v11875, %v11976
  %v12166 = vadd.f32 %v11876, %v11979
  %v12167 = vadd.f32 %v11877, %v11982
  %v12168 = vadd.f32 %v11878, %v11985
  %v12169 = vadd.f32 %v11879, %v11988
  %v12170 = vadd.f32 %v11880, %v11991
  %v12171 = vadd.f32 %v11881, %v11994
  %v12172 = vadd.f32 %v11882, %v11997
  %v12173 = vadd.f32 %v11883, %v12000
  %v12174 = vadd.f32 %v11884, %v12003
  %v12175 = vadd.f32 %v11885, %v12006
  %v12176 = vadd.f32 %v11886, %v12009
  %v12177 = vadd.f32 %v11887, %v12012
  %v12178 = vadd.f32 %v11888, %v12015
  %v12179 = vadd.f32 %v11889, %v12018
  %v12180 = vadd.f32 %v11890, %v12021
  %v12181 = vadd.f32 %v11891, %v12024
  %v12182 = vadd.f32 %v11892, %v12027
  %v12183 = vadd.f32 %v11893, %v12030
  %v12184 = vadd.f32 %v11894, %v12033
  %v12185 = vadd.f32 %v11895, %v12036
  %v12186 = vadd.f32 %v11896, %v12039
  %v12187 = vadd.f32 %v11897, %v12042
  %v12188 = vadd.f32 %v11898, %v12045
  %v12189 = vadd.f32 %v11899, %v12048
  %v12190 = vadd.f32 %v11900, %v12051
  %v12191 = vadd.f32 %v11901, %v12054
  %v12192 = vadd.f32 %v11902, %v12057
  %v12193 = vadd.f32 %v11903, %v12060
  %v12194 = vadd.f32 %v11904, %v12063
  %v12195 = vadd.f32 %v11905, %v12066
  %v12196 = vadd.f32 %v11906, %v12069
  %v12197 = vadd.f32 %v11907, %v12072
  %v12198 = vadd.f32 %v11908, %v12075
  %v12199 = vadd.f32 %v11909, %v12078
  %v12200 = vadd.f32 %v11910, %v12081
  %v12201 = vadd.f32 %v11911, %v12084
  %v12202 = vadd.f32 %v11912, %v12087
  %v12203 = vadd.f32 %v11913, %v12090
  %v12204 = vadd.f32 %v11914, %v12093
  %v12205 = vadd.f32 %v11915, %v12096
  %v12206 = vadd.f32 %v11916, %v12099
  %v12207 = vadd.f32 %v11917, %v12102
  %v12208 = vadd.f32 %v11918, %v12105
  %v12209 = vadd.f32 %v11919, %v12108
  %v12210 = vadd.f32 %v11920, %v12111
  %v12211 = vadd.f32 %v11921, %v12114
  %v12212 = vadd.f32 %v11922, %v12117
  %v12213 = vadd.f32 %v11923, %v12120
  %v12214 = vadd.f32 %v11924, %v12123
  %v12215 = vadd.f32 %v11925, %v12126
  %v12216 = vadd.f32 %v11926, %v12129
  %v12217 = vadd.f32 %v11927, %v12132
  %v12218 = vadd.f32 %v11928, %v12135
  %v12219 = vadd.f32 %v11929, %v12138
  %v12220 = vadd.f32 %v11930, %v12141
  %v12221 = vadd.f32 %v11931, %v12144
  %v12222 = vadd.f32 %v11932, %v12147
  %v12223 = vadd.f32 %v11933, %v12150
  %v12224 = vadd.f32 %v11934, %v12153
  %v12225 = vadd.f32 %v11935, %v12156
  %v12226 = vadd.f32 %v11936, %v12159
  %v12227 = vadd.f32 %v11937, %v12162
  %v12228 = vld [vmem:[%s5] sm:$0x1]
  %v12230 = vperm.slane %v12228, 0
  %v12232 = vadd.f32 %v12164, %v12230
  %v12233 = vadd.f32 %v12165, %v12230
  %v12234 = vadd.f32 %v12166, %v12230
  %v12235 = vadd.f32 %v12167, %v12230
  %v12236 = vadd.f32 %v12168, %v12230
  %v12237 = vadd.f32 %v12169, %v12230
  %v12238 = vadd.f32 %v12170, %v12230
  %v12239 = vadd.f32 %v12171, %v12230
  %v12240 = vadd.f32 %v12172, %v12230
  %v12241 = vadd.f32 %v12173, %v12230
  %v12242 = vadd.f32 %v12174, %v12230
  %v12243 = vadd.f32 %v12175, %v12230
  %v12244 = vadd.f32 %v12176, %v12230
  %v12245 = vadd.f32 %v12177, %v12230
  %v12246 = vadd.f32 %v12178, %v12230
  %v12247 = vadd.f32 %v12179, %v12230
  %v12248 = vadd.f32 %v12180, %v12230
  %v12249 = vadd.f32 %v12181, %v12230
  %v12250 = vadd.f32 %v12182, %v12230
  %v12251 = vadd.f32 %v12183, %v12230
  %v12252 = vadd.f32 %v12184, %v12230
  %v12253 = vadd.f32 %v12185, %v12230
  %v12254 = vadd.f32 %v12186, %v12230
  %v12255 = vadd.f32 %v12187, %v12230
  %v12256 = vadd.f32 %v12188, %v12230
  %v12257 = vadd.f32 %v12189, %v12230
  %v12258 = vadd.f32 %v12190, %v12230
  %v12259 = vadd.f32 %v12191, %v12230
  %v12260 = vadd.f32 %v12192, %v12230
  %v12261 = vadd.f32 %v12193, %v12230
  %v12262 = vadd.f32 %v12194, %v12230
  %v12263 = vadd.f32 %v12195, %v12230
  %v12264 = vadd.f32 %v12196, %v12230
  %v12265 = vadd.f32 %v12197, %v12230
  %v12266 = vadd.f32 %v12198, %v12230
  %v12267 = vadd.f32 %v12199, %v12230
  %v12268 = vadd.f32 %v12200, %v12230
  %v12269 = vadd.f32 %v12201, %v12230
  %v12270 = vadd.f32 %v12202, %v12230
  %v12271 = vadd.f32 %v12203, %v12230
  %v12272 = vadd.f32 %v12204, %v12230
  %v12273 = vadd.f32 %v12205, %v12230
  %v12274 = vadd.f32 %v12206, %v12230
  %v12275 = vadd.f32 %v12207, %v12230
  %v12276 = vadd.f32 %v12208, %v12230
  %v12277 = vadd.f32 %v12209, %v12230
  %v12278 = vadd.f32 %v12210, %v12230
  %v12279 = vadd.f32 %v12211, %v12230
  %v12280 = vadd.f32 %v12212, %v12230
  %v12281 = vadd.f32 %v12213, %v12230
  %v12282 = vadd.f32 %v12214, %v12230
  %v12283 = vadd.f32 %v12215, %v12230
  %v12284 = vadd.f32 %v12216, %v12230
  %v12285 = vadd.f32 %v12217, %v12230
  %v12286 = vadd.f32 %v12218, %v12230
  %v12287 = vadd.f32 %v12219, %v12230
  %v12288 = vadd.f32 %v12220, %v12230
  %v12289 = vadd.f32 %v12221, %v12230
  %v12290 = vadd.f32 %v12222, %v12230
  %v12291 = vadd.f32 %v12223, %v12230
  %v12292 = vadd.f32 %v12224, %v12230
  %v12293 = vadd.f32 %v12225, %v12230
  %v12294 = vadd.f32 %v12226, %v12230
  %v12295 = vadd.f32 %v12227, %v12230
  %v12296 = vmax.f32 %v12232, 0.0
  %v12297 = vmax.f32 %v12233, 0.0
  %v12298 = vmax.f32 %v12234, 0.0
  %v12299 = vmax.f32 %v12235, 0.0
  %v12300 = vmax.f32 %v12236, 0.0
  %v12301 = vmax.f32 %v12237, 0.0
  %v12302 = vmax.f32 %v12238, 0.0
  %v12303 = vmax.f32 %v12239, 0.0
  %v12304 = vmax.f32 %v12240, 0.0
  %v12305 = vmax.f32 %v12241, 0.0
  %v12306 = vmax.f32 %v12242, 0.0
  %v12307 = vmax.f32 %v12243, 0.0
  %v12308 = vmax.f32 %v12244, 0.0
  %v12309 = vmax.f32 %v12245, 0.0
  %v12310 = vmax.f32 %v12246, 0.0
  %v12311 = vmax.f32 %v12247, 0.0
  %v12312 = vmax.f32 %v12248, 0.0
  %v12313 = vmax.f32 %v12249, 0.0
  %v12314 = vmax.f32 %v12250, 0.0
  %v12315 = vmax.f32 %v12251, 0.0
  %v12316 = vmax.f32 %v12252, 0.0
  %v12317 = vmax.f32 %v12253, 0.0
  %v12318 = vmax.f32 %v12254, 0.0
  %v12319 = vmax.f32 %v12255, 0.0
  %v12320 = vmax.f32 %v12256, 0.0
  %v12321 = vmax.f32 %v12257, 0.0
  %v12322 = vmax.f32 %v12258, 0.0
  %v12323 = vmax.f32 %v12259, 0.0
  %v12324 = vmax.f32 %v12260, 0.0
  %v12325 = vmax.f32 %v12261, 0.0
  %v12326 = vmax.f32 %v12262, 0.0
  %v12327 = vmax.f32 %v12263, 0.0
  %v12328 = vmax.f32 %v12264, 0.0
  %v12329 = vmax.f32 %v12265, 0.0
  %v12330 = vmax.f32 %v12266, 0.0
  %v12331 = vmax.f32 %v12267, 0.0
  %v12332 = vmax.f32 %v12268, 0.0
  %v12333 = vmax.f32 %v12269, 0.0
  %v12334 = vmax.f32 %v12270, 0.0
  %v12335 = vmax.f32 %v12271, 0.0
  %v12336 = vmax.f32 %v12272, 0.0
  %v12337 = vmax.f32 %v12273, 0.0
  %v12338 = vmax.f32 %v12274, 0.0
  %v12339 = vmax.f32 %v12275, 0.0
  %v12340 = vmax.f32 %v12276, 0.0
  %v12341 = vmax.f32 %v12277, 0.0
  %v12342 = vmax.f32 %v12278, 0.0
  %v12343 = vmax.f32 %v12279, 0.0
  %v12344 = vmax.f32 %v12280, 0.0
  %v12345 = vmax.f32 %v12281, 0.0
  %v12346 = vmax.f32 %v12282, 0.0
  %v12347 = vmax.f32 %v12283, 0.0
  %v12348 = vmax.f32 %v12284, 0.0
  %v12349 = vmax.f32 %v12285, 0.0
  %v12350 = vmax.f32 %v12286, 0.0
  %v12351 = vmax.f32 %v12287, 0.0
  %v12352 = vmax.f32 %v12288, 0.0
  %v12353 = vmax.f32 %v12289, 0.0
  %v12354 = vmax.f32 %v12290, 0.0
  %v12355 = vmax.f32 %v12291, 0.0
  %v12356 = vmax.f32 %v12292, 0.0
  %v12357 = vmax.f32 %v12293, 0.0
  %v12358 = vmax.f32 %v12294, 0.0
  %v12359 = vmax.f32 %v12295, 0.0
  %v12360 = vmax.f32 %v12296, %v12297
  %v12361 = vmax.f32 %v12298, %v12299
  %v12362 = vmax.f32 %v12300, %v12301
  %v12363 = vmax.f32 %v12302, %v12303
  %v12364 = vmax.f32 %v12312, %v12313
  %v12365 = vmax.f32 %v12314, %v12315
  %v12366 = vmax.f32 %v12316, %v12317
  %v12367 = vmax.f32 %v12318, %v12319
  %v12368 = vmax.f32 %v12328, %v12329
  %v12369 = vmax.f32 %v12330, %v12331
  %v12370 = vmax.f32 %v12332, %v12333
  %v12371 = vmax.f32 %v12334, %v12335
  %v12372 = vmax.f32 %v12344, %v12345
  %v12373 = vmax.f32 %v12346, %v12347
  %v12374 = vmax.f32 %v12348, %v12349
  %v12375 = vmax.f32 %v12350, %v12351
  %v12376 = vmax.f32 %v12304, %v12305
  %v12377 = vmax.f32 %v12306, %v12307
  %v12378 = vmax.f32 %v12308, %v12309
  %v12379 = vmax.f32 %v12310, %v12311
  %v12380 = vmax.f32 %v12320, %v12321
  %v12381 = vmax.f32 %v12322, %v12323
  %v12382 = vmax.f32 %v12324, %v12325
  %v12383 = vmax.f32 %v12326, %v12327
  %v12384 = vmax.f32 %v12336, %v12337
  %v12385 = vmax.f32 %v12338, %v12339
  %v12386 = vmax.f32 %v12340, %v12341
  %v12387 = vmax.f32 %v12342, %v12343
  %v12388 = vmax.f32 %v12352, %v12353
  %v12389 = vmax.f32 %v12354, %v12355
  %v12390 = vmax.f32 %v12356, %v12357
  %v12391 = vmax.f32 %v12358, %v12359
  %v12392 = vmax.f32 %v12360, %v12376
  %v12393 = vmax.f32 %v12361, %v12377
  %v12394 = vmax.f32 %v12362, %v12378
  %v12395 = vmax.f32 %v12363, %v12379
  %v12396 = vmax.f32 %v12364, %v12380
  %v12397 = vmax.f32 %v12365, %v12381
  %v12398 = vmax.f32 %v12366, %v12382
  %v12399 = vmax.f32 %v12367, %v12383
  %v12400 = vmax.f32 %v12368, %v12384
  %v12401 = vmax.f32 %v12369, %v12385
  %v12402 = vmax.f32 %v12370, %v12386
  %v12403 = vmax.f32 %v12371, %v12387
  %v12404 = vmax.f32 %v12372, %v12388
  %v12405 = vmax.f32 %v12373, %v12389
  %v12406 = vmax.f32 %v12374, %v12390
  %v12407 = vmax.f32 %v12375, %v12391
  %v12408 = vld [vmem:[%s6] sm:$0xff]
  %v12409 = vld [vmem:[%s6 + $0x8] sm:$0xff]
  %v12410 = vld [vmem:[%s6 + $0x10] sm:$0xff]
  %v12411 = vld [vmem:[%s6 + $0x18] sm:$0xff]
  %v12412 = vld [vmem:[%s6 + $0x20] sm:$0xff]
  %v12413 = vld [vmem:[%s6 + $0x28] sm:$0xff]
  %v12414 = vld [vmem:[%s6 + $0x30] sm:$0xff]
  %v12415 = vld [vmem:[%s6 + $0x38] sm:$0xff]
  %v12416 = vld [vmem:[%s6 + $0x40] sm:$0xff]
  %v12417 = vld [vmem:[%s6 + $0x48] sm:$0xff]
  %v12418 = vld [vmem:[%s6 + $0x50] sm:$0xff]
  %v12419 = vld [vmem:[%s6 + $0x58] sm:$0xff]
  %v12420 = vld [vmem:[%s6 + $0x60] sm:$0xff]
  %v12421 = vld [vmem:[%s6 + $0x68] sm:$0xff]
  %v12422 = vld [vmem:[%s6 + $0x70] sm:$0xff]
  %v12423 = vld [vmem:[%s6 + $0x78] sm:$0xff]
  %s12424 = scalar_lea.vmem %s6, 128
  %v12425 = vld [vmem:[%s12424] sm:$0xff]
  %v12426 = vld [vmem:[%s12424 + $0x8] sm:$0xff]
  %v12427 = vld [vmem:[%s12424 + $0x10] sm:$0xff]
  %v12428 = vld [vmem:[%s12424 + $0x18] sm:$0xff]
  %v12429 = vld [vmem:[%s12424 + $0x20] sm:$0xff]
  %v12430 = vld [vmem:[%s12424 + $0x28] sm:$0xff]
  %v12431 = vld [vmem:[%s12424 + $0x30] sm:$0xff]
  %v12432 = vld [vmem:[%s12424 + $0x38] sm:$0xff]
  %v12433 = vld [vmem:[%s12424 + $0x40] sm:$0xff]
  %v12434 = vld [vmem:[%s12424 + $0x48] sm:$0xff]
  %v12435 = vld [vmem:[%s12424 + $0x50] sm:$0xff]
  %v12436 = vld [vmem:[%s12424 + $0x58] sm:$0xff]
  %v12437 = vld [vmem:[%s12424 + $0x60] sm:$0xff]
  %v12438 = vld [vmem:[%s12424 + $0x68] sm:$0xff]
  %v12439 = vld [vmem:[%s12424 + $0x70] sm:$0xff]
  %v12440 = vld [vmem:[%s12424 + $0x78] sm:$0xff]
  %12441 = vmatpush.msra.mxu0 %v12440
  %12442 = vmatpush.msra.mxu0 %v12439
  %12443 = vmatpush.msra.mxu0 %v12438
  %12444 = vmatpush.msra.mxu0 %v12437
  %12445 = vmatpush.msra.mxu0 %v12436
  %12446 = vmatpush.msra.mxu0 %v12435
  %12447 = vmatpush.msra.mxu0 %v12434
  %12448 = vmatpush.msra.mxu0 %v12433
  %12449 = vmatpush.msra.mxu0 %v12432
  %12450 = vmatpush.msra.mxu0 %v12431
  %12451 = vmatpush.msra.mxu0 %v12430
  %12452 = vmatpush.msra.mxu0 %v12429
  %12453 = vmatpush.msra.mxu0 %v12428
  %12454 = vmatpush.msra.mxu0 %v12427
  %12455 = vmatpush.msra.mxu0 %v12426
  %12456 = vmatpush.msra.mxu0 %v12425
  %12457 = vmatmul.f32.gmra.mxu0 %v12393
  %v12458 = vpop.f32.mrf.mxu0
  %v12459 = vadd.f32 0.0, %v12458
  %12460 = vdwg.mxu0
  %12461 = vmatpush.msra.mxu0 %v12423
  %12462 = vmatpush.msra.mxu0 %v12422
  %12463 = vmatpush.msra.mxu0 %v12421
  %12464 = vmatpush.msra.mxu0 %v12420
  %12465 = vmatpush.msra.mxu0 %v12419
  %12466 = vmatpush.msra.mxu0 %v12418
  %12467 = vmatpush.msra.mxu0 %v12417
  %12468 = vmatpush.msra.mxu0 %v12416
  %12469 = vmatpush.msra.mxu0 %v12415
  %12470 = vmatpush.msra.mxu0 %v12414
  %12471 = vmatpush.msra.mxu0 %v12413
  %12472 = vmatpush.msra.mxu0 %v12412
  %12473 = vmatpush.msra.mxu0 %v12411
  %12474 = vmatpush.msra.mxu0 %v12410
  %12475 = vmatpush.msra.mxu0 %v12409
  %12476 = vmatpush.msra.mxu0 %v12408
  %12477 = vmatmul.f32.gmra.mxu0 %v12392
  %v12478 = vpop.f32.mrf.mxu0
  %v12479 = vadd.f32 %v12459, %v12478
  %12480 = vdwg.mxu0
  %s12481 = scalar_lea.vmem %s6, 256
  %v12482 = vld [vmem:[%s12481] sm:$0xff]
  %v12483 = vld [vmem:[%s12481 + $0x8] sm:$0xff]
  %v12484 = vld [vmem:[%s12481 + $0x10] sm:$0xff]
  %v12485 = vld [vmem:[%s12481 + $0x18] sm:$0xff]
  %v12486 = vld [vmem:[%s12481 + $0x20] sm:$0xff]
  %v12487 = vld [vmem:[%s12481 + $0x28] sm:$0xff]
  %v12488 = vld [vmem:[%s12481 + $0x30] sm:$0xff]
  %v12489 = vld [vmem:[%s12481 + $0x38] sm:$0xff]
  %v12490 = vld [vmem:[%s12481 + $0x40] sm:$0xff]
  %v12491 = vld [vmem:[%s12481 + $0x48] sm:$0xff]
  %v12492 = vld [vmem:[%s12481 + $0x50] sm:$0xff]
  %v12493 = vld [vmem:[%s12481 + $0x58] sm:$0xff]
  %v12494 = vld [vmem:[%s12481 + $0x60] sm:$0xff]
  %v12495 = vld [vmem:[%s12481 + $0x68] sm:$0xff]
  %v12496 = vld [vmem:[%s12481 + $0x70] sm:$0xff]
  %v12497 = vld [vmem:[%s12481 + $0x78] sm:$0xff]
  %12498 = vmatpush.msra.mxu0 %v12497
  %12499 = vmatpush.msra.mxu0 %v12496
  %12500 = vmatpush.msra.mxu0 %v12495
  %12501 = vmatpush.msra.mxu0 %v12494
  %12502 = vmatpush.msra.mxu0 %v12493
  %12503 = vmatpush.msra.mxu0 %v12492
  %12504 = vmatpush.msra.mxu0 %v12491
  %12505 = vmatpush.msra.mxu0 %v12490
  %12506 = vmatpush.msra.mxu0 %v12489
  %12507 = vmatpush.msra.mxu0 %v12488
  %12508 = vmatpush.msra.mxu0 %v12487
  %12509 = vmatpush.msra.mxu0 %v12486
  %12510 = vmatpush.msra.mxu0 %v12485
  %12511 = vmatpush.msra.mxu0 %v12484
  %12512 = vmatpush.msra.mxu0 %v12483
  %12513 = vmatpush.msra.mxu0 %v12482
  %12514 = vmatmul.f32.gmra.mxu0 %v12394
  %v12515 = vpop.f32.mrf.mxu0
  %v12516 = vadd.f32 0.0, %v12515
  %12517 = vdwg.mxu0
  %v12518 = vadd.f32 %v12479, %v12516
  %s12519 = scalar_lea.vmem %s6, 384
  %v12520 = vld [vmem:[%s12519] sm:$0xff]
  %v12521 = vld [vmem:[%s12519 + $0x8] sm:$0xff]
  %v12522 = vld [vmem:[%s12519 + $0x10] sm:$0xff]
  %v12523 = vld [vmem:[%s12519 + $0x18] sm:$0xff]
  %v12524 = vld [vmem:[%s12519 + $0x20] sm:$0xff]
  %v12525 = vld [vmem:[%s12519 + $0x28] sm:$0xff]
  %v12526 = vld [vmem:[%s12519 + $0x30] sm:$0xff]
  %v12527 = vld [vmem:[%s12519 + $0x38] sm:$0xff]
  %v12528 = vld [vmem:[%s12519 + $0x40] sm:$0xff]
  %v12529 = vld [vmem:[%s12519 + $0x48] sm:$0xff]
  %v12530 = vld [vmem:[%s12519 + $0x50] sm:$0xff]
  %v12531 = vld [vmem:[%s12519 + $0x58] sm:$0xff]
  %v12532 = vld [vmem:[%s12519 + $0x60] sm:$0xff]
  %v12533 = vld [vmem:[%s12519 + $0x68] sm:$0xff]
  %v12534 = vld [vmem:[%s12519 + $0x70] sm:$0xff]
  %v12535 = vld [vmem:[%s12519 + $0x78] sm:$0xff]
  %12536 = vmatpush.msra.mxu0 %v12535
  %12537 = vmatpush.msra.mxu0 %v12534
  %12538 = vmatpush.msra.mxu0 %v12533
  %12539 = vmatpush.msra.mxu0 %v12532
  %12540 = vmatpush.msra.mxu0 %v12531
  %12541 = vmatpush.msra.mxu0 %v12530
  %12542 = vmatpush.msra.mxu0 %v12529
  %12543 = vmatpush.msra.mxu0 %v12528
  %12544 = vmatpush.msra.mxu0 %v12527
  %12545 = vmatpush.msra.mxu0 %v12526
  %12546 = vmatpush.msra.mxu0 %v12525
  %12547 = vmatpush.msra.mxu0 %v12524
  %12548 = vmatpush.msra.mxu0 %v12523
  %12549 = vmatpush.msra.mxu0 %v12522
  %12550 = vmatpush.msra.mxu0 %v12521
  %12551 = vmatpush.msra.mxu0 %v12520
  %12552 = vmatmul.f32.gmra.mxu0 %v12395
  %v12553 = vpop.f32.mrf.mxu0
  %v12554 = vadd.f32 0.0, %v12553
  %12555 = vdwg.mxu0
  %v12556 = vadd.f32 %v12518, %v12554
  %s12557 = scalar_lea.vmem %s6, 512
  %v12558 = vld [vmem:[%s12557] sm:$0xff]
  %v12559 = vld [vmem:[%s12557 + $0x8] sm:$0xff]
  %v12560 = vld [vmem:[%s12557 + $0x10] sm:$0xff]
  %v12561 = vld [vmem:[%s12557 + $0x18] sm:$0xff]
  %v12562 = vld [vmem:[%s12557 + $0x20] sm:$0xff]
  %v12563 = vld [vmem:[%s12557 + $0x28] sm:$0xff]
  %v12564 = vld [vmem:[%s12557 + $0x30] sm:$0xff]
  %v12565 = vld [vmem:[%s12557 + $0x38] sm:$0xff]
  %v12566 = vld [vmem:[%s12557 + $0x40] sm:$0xff]
  %v12567 = vld [vmem:[%s12557 + $0x48] sm:$0xff]
  %v12568 = vld [vmem:[%s12557 + $0x50] sm:$0xff]
  %v12569 = vld [vmem:[%s12557 + $0x58] sm:$0xff]
  %v12570 = vld [vmem:[%s12557 + $0x60] sm:$0xff]
  %v12571 = vld [vmem:[%s12557 + $0x68] sm:$0xff]
  %v12572 = vld [vmem:[%s12557 + $0x70] sm:$0xff]
  %v12573 = vld [vmem:[%s12557 + $0x78] sm:$0xff]
  %12574 = vmatpush.msra.mxu0 %v12573
  %12575 = vmatpush.msra.mxu0 %v12572
  %12576 = vmatpush.msra.mxu0 %v12571
  %12577 = vmatpush.msra.mxu0 %v12570
  %12578 = vmatpush.msra.mxu0 %v12569
  %12579 = vmatpush.msra.mxu0 %v12568
  %12580 = vmatpush.msra.mxu0 %v12567
  %12581 = vmatpush.msra.mxu0 %v12566
  %12582 = vmatpush.msra.mxu0 %v12565
  %12583 = vmatpush.msra.mxu0 %v12564
  %12584 = vmatpush.msra.mxu0 %v12563
  %12585 = vmatpush.msra.mxu0 %v12562
  %12586 = vmatpush.msra.mxu0 %v12561
  %12587 = vmatpush.msra.mxu0 %v12560
  %12588 = vmatpush.msra.mxu0 %v12559
  %12589 = vmatpush.msra.mxu0 %v12558
  %12590 = vmatmul.f32.gmra.mxu0 %v12396
  %v12591 = vpop.f32.mrf.mxu0
  %v12592 = vadd.f32 0.0, %v12591
  %12593 = vdwg.mxu0
  %v12594 = vadd.f32 %v12556, %v12592
  %s12595 = scalar_lea.vmem %s6, 640
  %v12596 = vld [vmem:[%s12595] sm:$0xff]
  %v12597 = vld [vmem:[%s12595 + $0x8] sm:$0xff]
  %v12598 = vld [vmem:[%s12595 + $0x10] sm:$0xff]
  %v12599 = vld [vmem:[%s12595 + $0x18] sm:$0xff]
  %v12600 = vld [vmem:[%s12595 + $0x20] sm:$0xff]
  %v12601 = vld [vmem:[%s12595 + $0x28] sm:$0xff]
  %v12602 = vld [vmem:[%s12595 + $0x30] sm:$0xff]
  %v12603 = vld [vmem:[%s12595 + $0x38] sm:$0xff]
  %v12604 = vld [vmem:[%s12595 + $0x40] sm:$0xff]
  %v12605 = vld [vmem:[%s12595 + $0x48] sm:$0xff]
  %v12606 = vld [vmem:[%s12595 + $0x50] sm:$0xff]
  %v12607 = vld [vmem:[%s12595 + $0x58] sm:$0xff]
  %v12608 = vld [vmem:[%s12595 + $0x60] sm:$0xff]
  %v12609 = vld [vmem:[%s12595 + $0x68] sm:$0xff]
  %v12610 = vld [vmem:[%s12595 + $0x70] sm:$0xff]
  %v12611 = vld [vmem:[%s12595 + $0x78] sm:$0xff]
  %12612 = vmatpush.msra.mxu0 %v12611
  %12613 = vmatpush.msra.mxu0 %v12610
  %12614 = vmatpush.msra.mxu0 %v12609
  %12615 = vmatpush.msra.mxu0 %v12608
  %12616 = vmatpush.msra.mxu0 %v12607
  %12617 = vmatpush.msra.mxu0 %v12606
  %12618 = vmatpush.msra.mxu0 %v12605
  %12619 = vmatpush.msra.mxu0 %v12604
  %12620 = vmatpush.msra.mxu0 %v12603
  %12621 = vmatpush.msra.mxu0 %v12602
  %12622 = vmatpush.msra.mxu0 %v12601
  %12623 = vmatpush.msra.mxu0 %v12600
  %12624 = vmatpush.msra.mxu0 %v12599
  %12625 = vmatpush.msra.mxu0 %v12598
  %12626 = vmatpush.msra.mxu0 %v12597
  %12627 = vmatpush.msra.mxu0 %v12596
  %12628 = vmatmul.f32.gmra.mxu0 %v12397
  %v12629 = vpop.f32.mrf.mxu0
  %v12630 = vadd.f32 0.0, %v12629
  %12631 = vdwg.mxu0
  %v12632 = vadd.f32 %v12594, %v12630
  %s12633 = scalar_lea.vmem %s6, 768
  %v12634 = vld [vmem:[%s12633] sm:$0xff]
  %v12635 = vld [vmem:[%s12633 + $0x8] sm:$0xff]
  %v12636 = vld [vmem:[%s12633 + $0x10] sm:$0xff]
  %v12637 = vld [vmem:[%s12633 + $0x18] sm:$0xff]
  %v12638 = vld [vmem:[%s12633 + $0x20] sm:$0xff]
  %v12639 = vld [vmem:[%s12633 + $0x28] sm:$0xff]
  %v12640 = vld [vmem:[%s12633 + $0x30] sm:$0xff]
  %v12641 = vld [vmem:[%s12633 + $0x38] sm:$0xff]
  %v12642 = vld [vmem:[%s12633 + $0x40] sm:$0xff]
  %v12643 = vld [vmem:[%s12633 + $0x48] sm:$0xff]
  %v12644 = vld [vmem:[%s12633 + $0x50] sm:$0xff]
  %v12645 = vld [vmem:[%s12633 + $0x58] sm:$0xff]
  %v12646 = vld [vmem:[%s12633 + $0x60] sm:$0xff]
  %v12647 = vld [vmem:[%s12633 + $0x68] sm:$0xff]
  %v12648 = vld [vmem:[%s12633 + $0x70] sm:$0xff]
  %v12649 = vld [vmem:[%s12633 + $0x78] sm:$0xff]
  %12650 = vmatpush.msra.mxu0 %v12649
  %12651 = vmatpush.msra.mxu0 %v12648
  %12652 = vmatpush.msra.mxu0 %v12647
  %12653 = vmatpush.msra.mxu0 %v12646
  %12654 = vmatpush.msra.mxu0 %v12645
  %12655 = vmatpush.msra.mxu0 %v12644
  %12656 = vmatpush.msra.mxu0 %v12643
  %12657 = vmatpush.msra.mxu0 %v12642
  %12658 = vmatpush.msra.mxu0 %v12641
  %12659 = vmatpush.msra.mxu0 %v12640
  %12660 = vmatpush.msra.mxu0 %v12639
  %12661 = vmatpush.msra.mxu0 %v12638
  %12662 = vmatpush.msra.mxu0 %v12637
  %12663 = vmatpush.msra.mxu0 %v12636
  %12664 = vmatpush.msra.mxu0 %v12635
  %12665 = vmatpush.msra.mxu0 %v12634
  %12666 = vmatmul.f32.gmra.mxu0 %v12398
  %v12667 = vpop.f32.mrf.mxu0
  %v12668 = vadd.f32 0.0, %v12667
  %12669 = vdwg.mxu0
  %v12670 = vadd.f32 %v12632, %v12668
  %s12671 = scalar_lea.vmem %s6, 896
  %v12672 = vld [vmem:[%s12671] sm:$0xff]
  %v12673 = vld [vmem:[%s12671 + $0x8] sm:$0xff]
  %v12674 = vld [vmem:[%s12671 + $0x10] sm:$0xff]
  %v12675 = vld [vmem:[%s12671 + $0x18] sm:$0xff]
  %v12676 = vld [vmem:[%s12671 + $0x20] sm:$0xff]
  %v12677 = vld [vmem:[%s12671 + $0x28] sm:$0xff]
  %v12678 = vld [vmem:[%s12671 + $0x30] sm:$0xff]
  %v12679 = vld [vmem:[%s12671 + $0x38] sm:$0xff]
  %v12680 = vld [vmem:[%s12671 + $0x40] sm:$0xff]
  %v12681 = vld [vmem:[%s12671 + $0x48] sm:$0xff]
  %v12682 = vld [vmem:[%s12671 + $0x50] sm:$0xff]
  %v12683 = vld [vmem:[%s12671 + $0x58] sm:$0xff]
  %v12684 = vld [vmem:[%s12671 + $0x60] sm:$0xff]
  %v12685 = vld [vmem:[%s12671 + $0x68] sm:$0xff]
  %v12686 = vld [vmem:[%s12671 + $0x70] sm:$0xff]
  %v12687 = vld [vmem:[%s12671 + $0x78] sm:$0xff]
  %12688 = vmatpush.msra.mxu0 %v12687
  %12689 = vmatpush.msra.mxu0 %v12686
  %12690 = vmatpush.msra.mxu0 %v12685
  %12691 = vmatpush.msra.mxu0 %v12684
  %12692 = vmatpush.msra.mxu0 %v12683
  %12693 = vmatpush.msra.mxu0 %v12682
  %12694 = vmatpush.msra.mxu0 %v12681
  %12695 = vmatpush.msra.mxu0 %v12680
  %12696 = vmatpush.msra.mxu0 %v12679
  %12697 = vmatpush.msra.mxu0 %v12678
  %12698 = vmatpush.msra.mxu0 %v12677
  %12699 = vmatpush.msra.mxu0 %v12676
  %12700 = vmatpush.msra.mxu0 %v12675
  %12701 = vmatpush.msra.mxu0 %v12674
  %12702 = vmatpush.msra.mxu0 %v12673
  %12703 = vmatpush.msra.mxu0 %v12672
  %12704 = vmatmul.f32.gmra.mxu0 %v12399
  %v12705 = vpop.f32.mrf.mxu0
  %v12706 = vadd.f32 0.0, %v12705
  %12707 = vdwg.mxu0
  %v12708 = vadd.f32 %v12670, %v12706
  %s12709 = scalar_lea.vmem %s6, 1024
  %v12710 = vld [vmem:[%s12709] sm:$0xff]
  %v12711 = vld [vmem:[%s12709 + $0x8] sm:$0xff]
  %v12712 = vld [vmem:[%s12709 + $0x10] sm:$0xff]
  %v12713 = vld [vmem:[%s12709 + $0x18] sm:$0xff]
  %v12714 = vld [vmem:[%s12709 + $0x20] sm:$0xff]
  %v12715 = vld [vmem:[%s12709 + $0x28] sm:$0xff]
  %v12716 = vld [vmem:[%s12709 + $0x30] sm:$0xff]
  %v12717 = vld [vmem:[%s12709 + $0x38] sm:$0xff]
  %v12718 = vld [vmem:[%s12709 + $0x40] sm:$0xff]
  %v12719 = vld [vmem:[%s12709 + $0x48] sm:$0xff]
  %v12720 = vld [vmem:[%s12709 + $0x50] sm:$0xff]
  %v12721 = vld [vmem:[%s12709 + $0x58] sm:$0xff]
  %v12722 = vld [vmem:[%s12709 + $0x60] sm:$0xff]
  %v12723 = vld [vmem:[%s12709 + $0x68] sm:$0xff]
  %v12724 = vld [vmem:[%s12709 + $0x70] sm:$0xff]
  %v12725 = vld [vmem:[%s12709 + $0x78] sm:$0xff]
  %12726 = vmatpush.msra.mxu0 %v12725
  %12727 = vmatpush.msra.mxu0 %v12724
  %12728 = vmatpush.msra.mxu0 %v12723
  %12729 = vmatpush.msra.mxu0 %v12722
  %12730 = vmatpush.msra.mxu0 %v12721
  %12731 = vmatpush.msra.mxu0 %v12720
  %12732 = vmatpush.msra.mxu0 %v12719
  %12733 = vmatpush.msra.mxu0 %v12718
  %12734 = vmatpush.msra.mxu0 %v12717
  %12735 = vmatpush.msra.mxu0 %v12716
  %12736 = vmatpush.msra.mxu0 %v12715
  %12737 = vmatpush.msra.mxu0 %v12714
  %12738 = vmatpush.msra.mxu0 %v12713
  %12739 = vmatpush.msra.mxu0 %v12712
  %12740 = vmatpush.msra.mxu0 %v12711
  %12741 = vmatpush.msra.mxu0 %v12710
  %12742 = vmatmul.f32.gmra.mxu0 %v12400
  %v12743 = vpop.f32.mrf.mxu0
  %v12744 = vadd.f32 0.0, %v12743
  %12745 = vdwg.mxu0
  %v12746 = vadd.f32 %v12708, %v12744
  %s12747 = scalar_lea.vmem %s6, 1152
  %v12748 = vld [vmem:[%s12747] sm:$0xff]
  %v12749 = vld [vmem:[%s12747 + $0x8] sm:$0xff]
  %v12750 = vld [vmem:[%s12747 + $0x10] sm:$0xff]
  %v12751 = vld [vmem:[%s12747 + $0x18] sm:$0xff]
  %v12752 = vld [vmem:[%s12747 + $0x20] sm:$0xff]
  %v12753 = vld [vmem:[%s12747 + $0x28] sm:$0xff]
  %v12754 = vld [vmem:[%s12747 + $0x30] sm:$0xff]
  %v12755 = vld [vmem:[%s12747 + $0x38] sm:$0xff]
  %v12756 = vld [vmem:[%s12747 + $0x40] sm:$0xff]
  %v12757 = vld [vmem:[%s12747 + $0x48] sm:$0xff]
  %v12758 = vld [vmem:[%s12747 + $0x50] sm:$0xff]
  %v12759 = vld [vmem:[%s12747 + $0x58] sm:$0xff]
  %v12760 = vld [vmem:[%s12747 + $0x60] sm:$0xff]
  %v12761 = vld [vmem:[%s12747 + $0x68] sm:$0xff]
  %v12762 = vld [vmem:[%s12747 + $0x70] sm:$0xff]
  %v12763 = vld [vmem:[%s12747 + $0x78] sm:$0xff]
  %12764 = vmatpush.msra.mxu0 %v12763
  %12765 = vmatpush.msra.mxu0 %v12762
  %12766 = vmatpush.msra.mxu0 %v12761
  %12767 = vmatpush.msra.mxu0 %v12760
  %12768 = vmatpush.msra.mxu0 %v12759
  %12769 = vmatpush.msra.mxu0 %v12758
  %12770 = vmatpush.msra.mxu0 %v12757
  %12771 = vmatpush.msra.mxu0 %v12756
  %12772 = vmatpush.msra.mxu0 %v12755
  %12773 = vmatpush.msra.mxu0 %v12754
  %12774 = vmatpush.msra.mxu0 %v12753
  %12775 = vmatpush.msra.mxu0 %v12752
  %12776 = vmatpush.msra.mxu0 %v12751
  %12777 = vmatpush.msra.mxu0 %v12750
  %12778 = vmatpush.msra.mxu0 %v12749
  %12779 = vmatpush.msra.mxu0 %v12748
  %12780 = vmatmul.f32.gmra.mxu0 %v12401
  %v12781 = vpop.f32.mrf.mxu0
  %v12782 = vadd.f32 0.0, %v12781
  %12783 = vdwg.mxu0
  %v12784 = vadd.f32 %v12746, %v12782
  %s12785 = scalar_lea.vmem %s6, 1280
  %v12786 = vld [vmem:[%s12785] sm:$0xff]
  %v12787 = vld [vmem:[%s12785 + $0x8] sm:$0xff]
  %v12788 = vld [vmem:[%s12785 + $0x10] sm:$0xff]
  %v12789 = vld [vmem:[%s12785 + $0x18] sm:$0xff]
  %v12790 = vld [vmem:[%s12785 + $0x20] sm:$0xff]
  %v12791 = vld [vmem:[%s12785 + $0x28] sm:$0xff]
  %v12792 = vld [vmem:[%s12785 + $0x30] sm:$0xff]
  %v12793 = vld [vmem:[%s12785 + $0x38] sm:$0xff]
  %v12794 = vld [vmem:[%s12785 + $0x40] sm:$0xff]
  %v12795 = vld [vmem:[%s12785 + $0x48] sm:$0xff]
  %v12796 = vld [vmem:[%s12785 + $0x50] sm:$0xff]
  %v12797 = vld [vmem:[%s12785 + $0x58] sm:$0xff]
  %v12798 = vld [vmem:[%s12785 + $0x60] sm:$0xff]
  %v12799 = vld [vmem:[%s12785 + $0x68] sm:$0xff]
  %v12800 = vld [vmem:[%s12785 + $0x70] sm:$0xff]
  %v12801 = vld [vmem:[%s12785 + $0x78] sm:$0xff]
  %12802 = vmatpush.msra.mxu0 %v12801
  %12803 = vmatpush.msra.mxu0 %v12800
  %12804 = vmatpush.msra.mxu0 %v12799
  %12805 = vmatpush.msra.mxu0 %v12798
  %12806 = vmatpush.msra.mxu0 %v12797
  %12807 = vmatpush.msra.mxu0 %v12796
  %12808 = vmatpush.msra.mxu0 %v12795
  %12809 = vmatpush.msra.mxu0 %v12794
  %12810 = vmatpush.msra.mxu0 %v12793
  %12811 = vmatpush.msra.mxu0 %v12792
  %12812 = vmatpush.msra.mxu0 %v12791
  %12813 = vmatpush.msra.mxu0 %v12790
  %12814 = vmatpush.msra.mxu0 %v12789
  %12815 = vmatpush.msra.mxu0 %v12788
  %12816 = vmatpush.msra.mxu0 %v12787
  %12817 = vmatpush.msra.mxu0 %v12786
  %12818 = vmatmul.f32.gmra.mxu0 %v12402
  %v12819 = vpop.f32.mrf.mxu0
  %v12820 = vadd.f32 0.0, %v12819
  %12821 = vdwg.mxu0
  %v12822 = vadd.f32 %v12784, %v12820
  %s12823 = scalar_lea.vmem %s6, 1408
  %v12824 = vld [vmem:[%s12823] sm:$0xff]
  %v12825 = vld [vmem:[%s12823 + $0x8] sm:$0xff]
  %v12826 = vld [vmem:[%s12823 + $0x10] sm:$0xff]
  %v12827 = vld [vmem:[%s12823 + $0x18] sm:$0xff]
  %v12828 = vld [vmem:[%s12823 + $0x20] sm:$0xff]
  %v12829 = vld [vmem:[%s12823 + $0x28] sm:$0xff]
  %v12830 = vld [vmem:[%s12823 + $0x30] sm:$0xff]
  %v12831 = vld [vmem:[%s12823 + $0x38] sm:$0xff]
  %v12832 = vld [vmem:[%s12823 + $0x40] sm:$0xff]
  %v12833 = vld [vmem:[%s12823 + $0x48] sm:$0xff]
  %v12834 = vld [vmem:[%s12823 + $0x50] sm:$0xff]
  %v12835 = vld [vmem:[%s12823 + $0x58] sm:$0xff]
  %v12836 = vld [vmem:[%s12823 + $0x60] sm:$0xff]
  %v12837 = vld [vmem:[%s12823 + $0x68] sm:$0xff]
  %v12838 = vld [vmem:[%s12823 + $0x70] sm:$0xff]
  %v12839 = vld [vmem:[%s12823 + $0x78] sm:$0xff]
  %12840 = vmatpush.msra.mxu0 %v12839
  %12841 = vmatpush.msra.mxu0 %v12838
  %12842 = vmatpush.msra.mxu0 %v12837
  %12843 = vmatpush.msra.mxu0 %v12836
  %12844 = vmatpush.msra.mxu0 %v12835
  %12845 = vmatpush.msra.mxu0 %v12834
  %12846 = vmatpush.msra.mxu0 %v12833
  %12847 = vmatpush.msra.mxu0 %v12832
  %12848 = vmatpush.msra.mxu0 %v12831
  %12849 = vmatpush.msra.mxu0 %v12830
  %12850 = vmatpush.msra.mxu0 %v12829
  %12851 = vmatpush.msra.mxu0 %v12828
  %12852 = vmatpush.msra.mxu0 %v12827
  %12853 = vmatpush.msra.mxu0 %v12826
  %12854 = vmatpush.msra.mxu0 %v12825
  %12855 = vmatpush.msra.mxu0 %v12824
  %12856 = vmatmul.f32.gmra.mxu0 %v12403
  %v12857 = vpop.f32.mrf.mxu0
  %v12858 = vadd.f32 0.0, %v12857
  %12859 = vdwg.mxu0
  %v12860 = vadd.f32 %v12822, %v12858
  %s12861 = scalar_lea.vmem %s6, 1536
  %v12862 = vld [vmem:[%s12861] sm:$0xff]
  %v12863 = vld [vmem:[%s12861 + $0x8] sm:$0xff]
  %v12864 = vld [vmem:[%s12861 + $0x10] sm:$0xff]
  %v12865 = vld [vmem:[%s12861 + $0x18] sm:$0xff]
  %v12866 = vld [vmem:[%s12861 + $0x20] sm:$0xff]
  %v12867 = vld [vmem:[%s12861 + $0x28] sm:$0xff]
  %v12868 = vld [vmem:[%s12861 + $0x30] sm:$0xff]
  %v12869 = vld [vmem:[%s12861 + $0x38] sm:$0xff]
  %v12870 = vld [vmem:[%s12861 + $0x40] sm:$0xff]
  %v12871 = vld [vmem:[%s12861 + $0x48] sm:$0xff]
  %v12872 = vld [vmem:[%s12861 + $0x50] sm:$0xff]
  %v12873 = vld [vmem:[%s12861 + $0x58] sm:$0xff]
  %v12874 = vld [vmem:[%s12861 + $0x60] sm:$0xff]
  %v12875 = vld [vmem:[%s12861 + $0x68] sm:$0xff]
  %v12876 = vld [vmem:[%s12861 + $0x70] sm:$0xff]
  %v12877 = vld [vmem:[%s12861 + $0x78] sm:$0xff]
  %12878 = vmatpush.msra.mxu0 %v12877
  %12879 = vmatpush.msra.mxu0 %v12876
  %12880 = vmatpush.msra.mxu0 %v12875
  %12881 = vmatpush.msra.mxu0 %v12874
  %12882 = vmatpush.msra.mxu0 %v12873
  %12883 = vmatpush.msra.mxu0 %v12872
  %12884 = vmatpush.msra.mxu0 %v12871
  %12885 = vmatpush.msra.mxu0 %v12870
  %12886 = vmatpush.msra.mxu0 %v12869
  %12887 = vmatpush.msra.mxu0 %v12868
  %12888 = vmatpush.msra.mxu0 %v12867
  %12889 = vmatpush.msra.mxu0 %v12866
  %12890 = vmatpush.msra.mxu0 %v12865
  %12891 = vmatpush.msra.mxu0 %v12864
  %12892 = vmatpush.msra.mxu0 %v12863
  %12893 = vmatpush.msra.mxu0 %v12862
  %12894 = vmatmul.f32.gmra.mxu0 %v12404
  %v12895 = vpop.f32.mrf.mxu0
  %v12896 = vadd.f32 0.0, %v12895
  %12897 = vdwg.mxu0
  %v12898 = vadd.f32 %v12860, %v12896
  %s12899 = scalar_lea.vmem %s6, 1664
  %v12900 = vld [vmem:[%s12899] sm:$0xff]
  %v12901 = vld [vmem:[%s12899 + $0x8] sm:$0xff]
  %v12902 = vld [vmem:[%s12899 + $0x10] sm:$0xff]
  %v12903 = vld [vmem:[%s12899 + $0x18] sm:$0xff]
  %v12904 = vld [vmem:[%s12899 + $0x20] sm:$0xff]
  %v12905 = vld [vmem:[%s12899 + $0x28] sm:$0xff]
  %v12906 = vld [vmem:[%s12899 + $0x30] sm:$0xff]
  %v12907 = vld [vmem:[%s12899 + $0x38] sm:$0xff]
  %v12908 = vld [vmem:[%s12899 + $0x40] sm:$0xff]
  %v12909 = vld [vmem:[%s12899 + $0x48] sm:$0xff]
  %v12910 = vld [vmem:[%s12899 + $0x50] sm:$0xff]
  %v12911 = vld [vmem:[%s12899 + $0x58] sm:$0xff]
  %v12912 = vld [vmem:[%s12899 + $0x60] sm:$0xff]
  %v12913 = vld [vmem:[%s12899 + $0x68] sm:$0xff]
  %v12914 = vld [vmem:[%s12899 + $0x70] sm:$0xff]
  %v12915 = vld [vmem:[%s12899 + $0x78] sm:$0xff]
  %12916 = vmatpush.msra.mxu0 %v12915
  %12917 = vmatpush.msra.mxu0 %v12914
  %12918 = vmatpush.msra.mxu0 %v12913
  %12919 = vmatpush.msra.mxu0 %v12912
  %12920 = vmatpush.msra.mxu0 %v12911
  %12921 = vmatpush.msra.mxu0 %v12910
  %12922 = vmatpush.msra.mxu0 %v12909
  %12923 = vmatpush.msra.mxu0 %v12908
  %12924 = vmatpush.msra.mxu0 %v12907
  %12925 = vmatpush.msra.mxu0 %v12906
  %12926 = vmatpush.msra.mxu0 %v12905
  %12927 = vmatpush.msra.mxu0 %v12904
  %12928 = vmatpush.msra.mxu0 %v12903
  %12929 = vmatpush.msra.mxu0 %v12902
  %12930 = vmatpush.msra.mxu0 %v12901
  %12931 = vmatpush.msra.mxu0 %v12900
  %12932 = vmatmul.f32.gmra.mxu0 %v12405
  %v12933 = vpop.f32.mrf.mxu0
  %v12934 = vadd.f32 0.0, %v12933
  %12935 = vdwg.mxu0
  %v12936 = vadd.f32 %v12898, %v12934
  %s12937 = scalar_lea.vmem %s6, 1792
  %v12938 = vld [vmem:[%s12937] sm:$0xff]
  %v12939 = vld [vmem:[%s12937 + $0x8] sm:$0xff]
  %v12940 = vld [vmem:[%s12937 + $0x10] sm:$0xff]
  %v12941 = vld [vmem:[%s12937 + $0x18] sm:$0xff]
  %v12942 = vld [vmem:[%s12937 + $0x20] sm:$0xff]
  %v12943 = vld [vmem:[%s12937 + $0x28] sm:$0xff]
  %v12944 = vld [vmem:[%s12937 + $0x30] sm:$0xff]
  %v12945 = vld [vmem:[%s12937 + $0x38] sm:$0xff]
  %v12946 = vld [vmem:[%s12937 + $0x40] sm:$0xff]
  %v12947 = vld [vmem:[%s12937 + $0x48] sm:$0xff]
  %v12948 = vld [vmem:[%s12937 + $0x50] sm:$0xff]
  %v12949 = vld [vmem:[%s12937 + $0x58] sm:$0xff]
  %v12950 = vld [vmem:[%s12937 + $0x60] sm:$0xff]
  %v12951 = vld [vmem:[%s12937 + $0x68] sm:$0xff]
  %v12952 = vld [vmem:[%s12937 + $0x70] sm:$0xff]
  %v12953 = vld [vmem:[%s12937 + $0x78] sm:$0xff]
  %12954 = vmatpush.msra.mxu0 %v12953
  %12955 = vmatpush.msra.mxu0 %v12952
  %12956 = vmatpush.msra.mxu0 %v12951
  %12957 = vmatpush.msra.mxu0 %v12950
  %12958 = vmatpush.msra.mxu0 %v12949
  %12959 = vmatpush.msra.mxu0 %v12948
  %12960 = vmatpush.msra.mxu0 %v12947
  %12961 = vmatpush.msra.mxu0 %v12946
  %12962 = vmatpush.msra.mxu0 %v12945
  %12963 = vmatpush.msra.mxu0 %v12944
  %12964 = vmatpush.msra.mxu0 %v12943
  %12965 = vmatpush.msra.mxu0 %v12942
  %12966 = vmatpush.msra.mxu0 %v12941
  %12967 = vmatpush.msra.mxu0 %v12940
  %12968 = vmatpush.msra.mxu0 %v12939
  %12969 = vmatpush.msra.mxu0 %v12938
  %12970 = vmatmul.f32.gmra.mxu0 %v12406
  %v12971 = vpop.f32.mrf.mxu0
  %v12972 = vadd.f32 0.0, %v12971
  %12973 = vdwg.mxu0
  %v12974 = vadd.f32 %v12936, %v12972
  %s12975 = scalar_lea.vmem %s6, 1920
  %v12976 = vld [vmem:[%s12975] sm:$0xff]
  %v12977 = vld [vmem:[%s12975 + $0x8] sm:$0xff]
  %v12978 = vld [vmem:[%s12975 + $0x10] sm:$0xff]
  %v12979 = vld [vmem:[%s12975 + $0x18] sm:$0xff]
  %v12980 = vld [vmem:[%s12975 + $0x20] sm:$0xff]
  %v12981 = vld [vmem:[%s12975 + $0x28] sm:$0xff]
  %v12982 = vld [vmem:[%s12975 + $0x30] sm:$0xff]
  %v12983 = vld [vmem:[%s12975 + $0x38] sm:$0xff]
  %v12984 = vld [vmem:[%s12975 + $0x40] sm:$0xff]
  %v12985 = vld [vmem:[%s12975 + $0x48] sm:$0xff]
  %v12986 = vld [vmem:[%s12975 + $0x50] sm:$0xff]
  %v12987 = vld [vmem:[%s12975 + $0x58] sm:$0xff]
  %v12988 = vld [vmem:[%s12975 + $0x60] sm:$0xff]
  %v12989 = vld [vmem:[%s12975 + $0x68] sm:$0xff]
  %v12990 = vld [vmem:[%s12975 + $0x70] sm:$0xff]
  %v12991 = vld [vmem:[%s12975 + $0x78] sm:$0xff]
  %12992 = vmatpush.msra.mxu0 %v12991
  %12993 = vmatpush.msra.mxu0 %v12990
  %12994 = vmatpush.msra.mxu0 %v12989
  %12995 = vmatpush.msra.mxu0 %v12988
  %12996 = vmatpush.msra.mxu0 %v12987
  %12997 = vmatpush.msra.mxu0 %v12986
  %12998 = vmatpush.msra.mxu0 %v12985
  %12999 = vmatpush.msra.mxu0 %v12984
  %13000 = vmatpush.msra.mxu0 %v12983
  %13001 = vmatpush.msra.mxu0 %v12982
  %13002 = vmatpush.msra.mxu0 %v12981
  %13003 = vmatpush.msra.mxu0 %v12980
  %13004 = vmatpush.msra.mxu0 %v12979
  %13005 = vmatpush.msra.mxu0 %v12978
  %13006 = vmatpush.msra.mxu0 %v12977
  %13007 = vmatpush.msra.mxu0 %v12976
  %13008 = vmatmul.f32.gmra.mxu0 %v12407
  %v13009 = vpop.f32.mrf.mxu0
  %v13010 = vadd.f32 0.0, %v13009
  %13011 = vdwg.mxu0
  %v13012 = vadd.f32 %v12974, %v13010
  %v13013 = vld [vmem:[%s7] sm:$0x1]
  %v13015 = vperm.slane %v13013, 0
  %v13017 = vadd.f32 %v13012, %v13015
  %v13018 = vmax.f32 %v13017, 0.0
  %v13019 = vld [vmem:[%s8] sm:$0xff]
  %v13020 = vld [vmem:[%s8 + $0x8] sm:$0xff]
  %v13021 = vld [vmem:[%s8 + $0x10] sm:$0xff]
  %v13022 = vld [vmem:[%s8 + $0x18] sm:$0xff]
  %v13023 = vld [vmem:[%s8 + $0x20] sm:$0xff]
  %v13024 = vld [vmem:[%s8 + $0x28] sm:$0xff]
  %v13025 = vld [vmem:[%s8 + $0x30] sm:$0xff]
  %v13026 = vld [vmem:[%s8 + $0x38] sm:$0xff]
  %v13027 = vld [vmem:[%s8 + $0x40] sm:$0xff]
  %v13028 = vld [vmem:[%s8 + $0x48] sm:$0xff]
  %v13029 = vld [vmem:[%s8 + $0x50] sm:$0xff]
  %v13030 = vld [vmem:[%s8 + $0x58] sm:$0xff]
  %v13031 = vld [vmem:[%s8 + $0x60] sm:$0xff]
  %v13032 = vld [vmem:[%s8 + $0x68] sm:$0xff]
  %v13033 = vld [vmem:[%s8 + $0x70] sm:$0xff]
  %v13034 = vld [vmem:[%s8 + $0x78] sm:$0xff]
  %v13035 = vld [vmem:[%s9] sm:$0x1]
  %v13037 = vperm.slane %v13035, 0
  %13039 = vmatpush.msra.mxu0 %v13034
  %13040 = vmatpush.msra.mxu0 %v13033
  %13041 = vmatpush.msra.mxu0 %v13032
  %13042 = vmatpush.msra.mxu0 %v13031
  %13043 = vmatpush.msra.mxu0 %v13030
  %13044 = vmatpush.msra.mxu0 %v13029
  %13045 = vmatpush.msra.mxu0 %v13028
  %13046 = vmatpush.msra.mxu0 %v13027
  %13047 = vmatpush.msra.mxu0 %v13026
  %13048 = vmatpush.msra.mxu0 %v13025
  %13049 = vmatpush.msra.mxu0 %v13024
  %13050 = vmatpush.msra.mxu0 %v13023
  %13051 = vmatpush.msra.mxu0 %v13022
  %13052 = vmatpush.msra.mxu0 %v13021
  %13053 = vmatpush.msra.mxu0 %v13020
  %13054 = vmatpush.msra.mxu0 %v13019
  %13055 = vmatmul.f32.gmra.mxu0 %v13018
  %v13056 = vpop.f32.mrf.mxu0
  %v13057 = vadd.f32 %v13037, %v13056
  %13058 = vdwg.mxu0
  %v13059 = vmax.f32 %v13057, 0.0
  %v13060 = vld [vmem:[%s10] sm:$0xff]
  %v13061 = vld [vmem:[%s10 + $0x8] sm:$0xff]
  %v13062 = vld [vmem:[%s10 + $0x10] sm:$0xff]
  %v13063 = vld [vmem:[%s10 + $0x18] sm:$0xff]
  %v13064 = vld [vmem:[%s10 + $0x20] sm:$0xff]
  %v13065 = vld [vmem:[%s10 + $0x28] sm:$0xff]
  %v13066 = vld [vmem:[%s10 + $0x30] sm:$0xff]
  %v13067 = vld [vmem:[%s10 + $0x38] sm:$0xff]
  %v13068 = vld [vmem:[%s10 + $0x40] sm:$0xff]
  %v13069 = vld [vmem:[%s10 + $0x48] sm:$0xff]
  %v13070 = vld [vmem:[%s10 + $0x50] sm:$0xff]
  %v13071 = vld [vmem:[%s10 + $0x58] sm:$0xff]
  %v13072 = vld [vmem:[%s10 + $0x60] sm:$0xff]
  %v13073 = vld [vmem:[%s10 + $0x68] sm:$0xff]
  %v13074 = vld [vmem:[%s10 + $0x70] sm:$0xff]
  %v13075 = vld [vmem:[%s10 + $0x78] sm:$0xff]
  %v13076 = vld [vmem:[%s11] sm:$0x1]
  %v13078 = vperm.slane %v13076, 0
  %13080 = vmatpush.msra.mxu0 %v13075
  %13081 = vmatpush.msra.mxu0 %v13074
  %13082 = vmatpush.msra.mxu0 %v13073
  %13083 = vmatpush.msra.mxu0 %v13072
  %13084 = vmatpush.msra.mxu0 %v13071
  %13085 = vmatpush.msra.mxu0 %v13070
  %13086 = vmatpush.msra.mxu0 %v13069
  %13087 = vmatpush.msra.mxu0 %v13068
  %13088 = vmatpush.msra.mxu0 %v13067
  %13089 = vmatpush.msra.mxu0 %v13066
  %13090 = vmatpush.msra.mxu0 %v13065
  %13091 = vmatpush.msra.mxu0 %v13064
  %13092 = vmatpush.msra.mxu0 %v13063
  %13093 = vmatpush.msra.mxu0 %v13062
  %13094 = vmatpush.msra.mxu0 %v13061
  %13095 = vmatpush.msra.mxu0 %v13060
  %13096 = vmatmul.f32.gmra.mxu0 %v13059
  %v13097 = vpop.f32.mrf.mxu0
  %v13098 = vadd.f32 %v13078, %v13097
  %13099 = vdwg.mxu0
  %v13100 = vlaneseq
  %v13101 = vand.u32 %v13100, 127
  %vm13102 = vcmp.lt.s32.totalorder %v13101, 10
  %v13103 = vsel %vm13102, %v13098, -1e+30
  %13104 = vmax.xlane.f32.xlu0 %v13103
  %v13105 = vpop.xlane.xlu0 %13104
  %v13106 = vsub.f32 %v13103, %v13105
  %v13107 = vmul.f32 %v13106, 1.442695
  %v13108 = vpow.pop %v13107
  %13109 = vadd.xlane.f32.xlu0 %v13108
  %v13110 = vpop.xlane.xlu0 %13109
  %v13111 = vlog2.pop %v13110
  %v13112 = vmul.f32 %v13111, 0.6931472
  %v13113 = vadd.f32 %v13105, %v13112
  %v13114 = vld [vmem:[%s1] sm:$0xff]
  %13115 = vset.pattern.permute.xlu0 0
  %13116 = vperm.xlu0 %13115, %v13114
  %v13117 = vpop.permute.xlu0 %13116
  %vm13118 = vcmp.eq.s32.totalorder %v13101, %v13117
  %v13119 = vsel %vm13118, %v13098, 0.0
  %13120 = vadd.xlane.f32.xlu0 %v13119
  %v13121 = vpop.xlane.xlu0 %13120
  %vm13122 = vcmp.ge.s32.totalorder %v13114, 0
  %v13123 = vsub.f32 %v13113, %v13121
  %v13124 = vsel %vm13122, %v13123, 0.0
  %13126 = vset.pattern.permute.xlu0 0
  %13127 = vperm.xlu0 %13126, %v13124
  %v13128 = vpop.permute.xlu0 %13127
  %13130 = vst [vmem:[%s12] sm:$0xff] %v13128
  // Predicated region
  $region50: #{lenet_forward.1} parent=0 // pred_check
    _
  $region51: #{lenet_forward.1} parent=0 // pred_check_branch
    %13132 = sbr.rel (0) target = $region53
  $region52: #{lenet_forward.1} parent=0 // pred_region
    _
  $region53: #{lenet_forward.1} parent=0 // pred_fallthru
    _
  // Predicated region
  $region54: #{lenet_forward.1} parent=0 // pred_check
    _
  $region55: #{lenet_forward.1} parent=0 // pred_check_branch
    %13134 = sbr.rel (0) target = $region57
  $region56: #{lenet_forward.1} parent=0 // pred_region
    _
  $region57: #{lenet_forward.1} parent=0 // pred_fallthru
    _

</llo_original>
